<compile_context>
chip_gen: v6e
topology: v6e:2x2x1
jax: 0.10.0
libtpu: 0.0.40
codegen_flags: <defaults>
</compile_context>

<pallas_src>
import functools

import jax
import jax.numpy as jnp
from jax.experimental import pallas as pl
from jax.experimental.pallas import tpu as pltpu


def _round_up(a, b):
    return (a + b - 1) // b * b


def gdc_kernel(x_ref, w_ref, b_ref, out_ref):
    # x_ref : (TN, C*K)  f32   activation tile, native NCHW order flattened
    # w_ref : (C*K, Ep)  bf16  fully folded weight (depthwise * BN2d * linear * BN1d)
    # b_ref : (1, Ep)    f32   fully folded bias
    # out   : (TN, Ep)   f32
    x_bf16 = x_ref[...].astype(jnp.bfloat16)   # VPU cast, hidden under the x DMA
    out_ref[...] = (
        jnp.dot(x_bf16, w_ref[...], preferred_element_type=jnp.float32)
        + b_ref[...]
    )


def fold_params(params, eps=1e-5, compute_dtype=jnp.bfloat16):
    """Fold depthwise conv + BN2d + Linear + BN1d into one (C*K, E_pad) weight + bias.

    Done once at param-prep time (eval-mode / running-stat semantics).
    """
    w_dw = params["w_dw"].astype(jnp.float32)                 # (C, 7, 7)
    C, KH, KW = w_dw.shape
    K = KH * KW
    w_lin_t = params["w_lin_t"].astype(jnp.float32)           # (C, E)
    E = w_lin_t.shape[1]

    s1 = params["bn2d_gamma"] / jnp.sqrt(params["bn2d_var"] + eps)   # (C,)
    b1 = params["bn2d_beta"] - params["bn2d_mean"] * s1              # (C,)
    s2 = params["bn1d_gamma"] / jnp.sqrt(params["bn1d_var"] + eps)   # (E,)
    b2 = params["bn1d_beta"] - params["bn1d_mean"] * s2              # (E,)

    w_fold = (s1[:, None] * w_lin_t) * s2[None, :]             # (C, E)
    b_fold = (b1 @ w_lin_t) * s2 + b2                          # (E,)

    # Fold the 49 depthwise taps into the matmul contraction dimension.
    dw = w_dw.reshape(C, K)                                    # (C, K)
    w_big = (dw[:, :, None] * w_fold[:, None, :]).reshape(C * K, E)  # (C*K, E)

    # Pad E up to a multiple of 128 lanes so output stores stay unmasked (vst, not vst.msk).
    E_pad = _round_up(E, 128)
    if E_pad != E:
        w_big = jnp.pad(w_big, ((0, 0), (0, E_pad - E)))
        b_fold = jnp.pad(b_fold, (0, E_pad - E))

    return w_big.astype(compute_dtype), b_fold.reshape(1, E_pad).astype(jnp.float32)


@functools.partial(jax.jit, static_argnames=("out_dim", "block_n"))
def gdc_forward(x_nchw, w_big, b_fold, *, out_dim, block_n=128):
    """x_nchw: (N, 512, 7, 7) float32. Returns (N, out_dim) float32."""
    N, C, H, W = x_nchw.shape
    CK = w_big.shape[0]
    E_pad = w_big.shape[1]
    assert C * H * W == CK, "folded weight does not match activation shape"

    # Native NCHW order flattened -- free reshape, no relayout / no dtype-cast HBM pass.
    x_flat = x_nchw.reshape(N, CK)

    # Batch tiling: TN=128 keeps double-buffered f32 activation tiles + the resident
    # bf16 weight at ~37 MiB -- within the 48 MiB scoped-VMEM limit below and under
    # v7x's 64 MiB physical VMEM, while amortizing per-step overhead.
    tn = min(block_n, _round_up(N, 8))
    n_pad = _round_up(N, tn)
    if n_pad != N:
        x_flat = jnp.pad(x_flat, ((0, n_pad - N), (0, 0)))

    out = pl.pallas_call(
        gdc_kernel,
        out_shape=jax.ShapeDtypeStruct((n_pad, E_pad), jnp.float32),
        grid_spec=pltpu.PrefetchScalarGridSpec(
            num_scalar_prefetch=0,
            grid=(n_pad // tn,),
            in_specs=[
                pl.BlockSpec((tn, CK), lambda i: (i, 0)),      # streamed over batch tiles
                pl.BlockSpec((CK, E_pad), lambda i: (0, 0)),   # VMEM-resident folded weight
                pl.BlockSpec((1, E_pad), lambda i: (0, 0)),    # VMEM-resident folded bias
            ],
            out_specs=pl.BlockSpec((tn, E_pad), lambda i: (i, 0)),
        ),
        compiler_params=pltpu.CompilerParams(
            dimension_semantics=("parallel",),   # shard batch tiles across TCs on v7x
            vmem_limit_bytes=48 * 1024 * 1024,
        ),
    )(x_flat, w_big, b_fold)

    return out[:N, :out_dim]


def gdc_reference(x_nchw, params):
    """Pure-JAX f32 reference for the same eval-mode forward pass."""
    eps = 1e-5
    pooled = jnp.sum(x_nchw * params["w_dw"][None, :, :, :], axis=(2, 3))   # (N, C)
    s1 = params["bn2d_gamma"] / jnp.sqrt(params["bn2d_var"] + eps)
    y = (pooled - params["bn2d_mean"]) * s1 + params["bn2d_beta"]
    z = y @ params["w_lin_t"]                                               # (N, E)
    s2 = params["bn1d_gamma"] / jnp.sqrt(params["bn1d_var"] + eps)
    return (z - params["bn1d_mean"]) * s2 + params["bn1d_beta"]


def init_params(key, embedding_size=128, in_c=512, kh=7, kw=7):
    ks = jax.random.split(key, 8)
    return {
        # depthwise Conv2d weight: (C, 7, 7) (groups=C so per-channel 7x7 filter)
        "w_dw": 0.1 * jax.random.normal(ks[0], (in_c, kh, kw), jnp.float32),
        # BatchNorm2d(512) eval-mode params / running stats
        "bn2d_gamma": 1.0 + 0.05 * jax.random.normal(ks[1], (in_c,), jnp.float32),
        "bn2d_beta": 0.05 * jax.random.normal(ks[2], (in_c,), jnp.float32),
        "bn2d_mean": 0.05 * jax.random.normal(ks[3], (in_c,), jnp.float32),
        "bn2d_var": jnp.abs(jax.random.normal(ks[4], (in_c,), jnp.float32)) + 0.5,
        # Linear(512 -> E, bias=False), stored transposed as (512, E)
        "w_lin_t": 0.05 * jax.random.normal(ks[5], (in_c, embedding_size), jnp.float32),
        # BatchNorm1d(E) eval-mode params / running stats
        "bn1d_gamma": 1.0 + 0.05 * jax.random.normal(ks[6], (embedding_size,), jnp.float32),
        "bn1d_beta": 0.05 * jax.random.normal(ks[7], (embedding_size,), jnp.float32),
        "bn1d_mean": jnp.zeros((embedding_size,), jnp.float32),
        "bn1d_var": jnp.ones((embedding_size,), jnp.float32),
    }


if __name__ == "__main__":
    key = jax.random.PRNGKey(0)
    k_x, k_p = jax.random.split(key)

    # The GDC head requires exactly 512 channels and 7x7 spatial (kernel == input size).
    N, C, H, W = 2, 512, 7, 7
    E = 128
    x = jax.random.normal(k_x, (N, C, H, W), jnp.float32)
    params = init_params(k_p, embedding_size=E)

    w_big, b_fold = fold_params(params)
    out = gdc_forward(x, w_big, b_fold, out_dim=E)
    out = jax.block_until_ready(out)

    ref = gdc_reference(x, params)
    assert out.shape == (N, E)
    # bf16 weight + in-kernel bf16 activation cast (f32 MXU accumulation) =>
    # looser tolerance than a pure-f32 pipeline.
    max_diff = jnp.max(jnp.abs(out - ref))
    assert jnp.allclose(out, ref, atol=2e-2, rtol=2e-2), f"mismatch vs reference (max |diff| = {max_diff})"

    print("KERNEL_OK")
</pallas_src>

<mosaic_0001>
module attributes {stable_mosaic.version = 11 : i64} {
  func.func @gdc_kernel(%arg0: i32, %arg1: memref<8x25088xf32, #tpu.memory_space<vmem>>, %arg2: memref<25088x128xbf16, #tpu.memory_space<vmem>>, %arg3: memref<1x128xf32, #tpu.memory_space<vmem>>, %arg4: memref<8x128xf32, #tpu.memory_space<vmem>>) attributes {dimension_semantics = [#tpu.dimension_semantics<parallel>], iteration_bounds = array<i64: 1>, scalar_prefetch = 0 : i64, scratch_operands = 0 : i64, tpu.core_type = #tpu.core_type<tc>, window_params = [{transform_indices = @transform_0, window_bounds = array<i64: 8, 25088>}, {pipeline_mode = #tpu.pipeline_mode<synchronous>, transform_indices = @transform_1, window_bounds = array<i64: 25088, 128>}, {pipeline_mode = #tpu.pipeline_mode<synchronous>, transform_indices = @transform_2, window_bounds = array<i64: 1, 128>}, {transform_indices = @transform_3, window_bounds = array<i64: 8, 128>}]} {
    %c0 = arith.constant 0 : index
    %c0_0 = arith.constant 0 : index
    %0 = vector.load %arg1[%c0, %c0_0] : memref<8x25088xf32, #tpu.memory_space<vmem>>, vector<8x25088xf32>
    %1 = arith.truncf %0 : vector<8x25088xf32> to vector<8x25088xbf16>
    %c0_1 = arith.constant 0 : index
    %c0_2 = arith.constant 0 : index
    %2 = vector.load %arg2[%c0_1, %c0_2] : memref<25088x128xbf16, #tpu.memory_space<vmem>>, vector<25088x128xbf16>
    %cst = arith.constant dense<0.000000e+00> : vector<8x128xf32>
    %3 = tpu.matmul %1, %2, %cst {dimension_numbers = #tpu.dot_dimension_numbers<[1], [0], [0], [1], [0, 0, 1, 1], [], []>} : vector<8x25088xbf16>, vector<25088x128xbf16>, vector<8x128xf32> -> vector<8x128xf32>
    %c0_3 = arith.constant 0 : index
    %c0_4 = arith.constant 0 : index
    %4 = vector.load %arg3[%c0_3, %c0_4] : memref<1x128xf32, #tpu.memory_space<vmem>>, vector<1x128xf32>
    %5 = vector.broadcast %4 : vector<1x128xf32> to vector<8x128xf32>
    %6 = arith.addf %3, %5 : vector<8x128xf32>
    %c0_5 = arith.constant 0 : index
    %c0_6 = arith.constant 0 : index
    %7 = vector.load %arg4[%c0_5, %c0_6] : memref<8x128xf32, #tpu.memory_space<vmem>>, vector<8x128xf32>
    tpu.vector_store %arg4[%c0_5, %c0_6], %6 {strides = array<i32>} : memref<8x128xf32, #tpu.memory_space<vmem>>, vector<8x128xf32>,
    return
  }
  func.func @transform_0(%arg0: i32) -> (i32, i32) {
    %c0_i32 = arith.constant 0 : i32
    %c0_i32_0 = arith.constant 0 : i32
    return %arg0, %c0_i32 : i32, i32
  }
  func.func @transform_1(%arg0: i32) -> (i32, i32) {
    %c0_i32 = arith.constant 0 : i32
    %c0_i32_0 = arith.constant 0 : i32
    %c0_i32_1 = arith.constant 0 : i32
    return %c0_i32, %c0_i32_0 : i32, i32
  }
  func.func @transform_2(%arg0: i32) -> (i32, i32) {
    %c0_i32 = arith.constant 0 : i32
    %c0_i32_0 = arith.constant 0 : i32
    %c0_i32_1 = arith.constant 0 : i32
    return %c0_i32, %c0_i32_0 : i32, i32
  }
  func.func @transform_3(%arg0: i32) -> (i32, i32) {
    %c0_i32 = arith.constant 0 : i32
    %c0_i32_0 = arith.constant 0 : i32
    return %arg0, %c0_i32 : i32, i32
  }
}

</mosaic_0001>

<llo_original>
// kernel: gdc_forward.1
$region0: #{gdc_forward.1}
  #allocation0 [shape = 'u32[]', space=smem, size = 0x4, offset = 0x4, fixed_abs, tag = 'smem constant byte address 0x4 - core index']
  #allocation1 [shape = 'u32[144,128]{1,0:T(1,128)}', space=vmem, size = 0x12000, scoped, tag = 'internal scratch']
  %s0 = inlined_call_operand.vmem [shape: f32[8,25088], index: 0, kind: input, shape index: {}]
  %s1 = inlined_call_operand.vmem [shape: bf16[25088,128], index: 1, kind: input, shape index: {}]
  %s2 = inlined_call_operand.vmem [shape: f32[1,128], index: 2, kind: input, shape index: {}]
  %s3 = inlined_call_operand.vmem [shape: f32[8,128], index: 3, kind: output, shape index: {}]
  %s4 = sld [smem:[#allocation0]]
  $region22: #{gdc_forward.1} parent=0
    _
  %s6 = ssub.s32 1, %s4
  %s7 = scalar_select 0, %s6, %s4
  // Predicated region
  $region2: #{gdc_forward.1} parent=0 // pred_check
    _
  $region3: #{gdc_forward.1} parent=0 // pred_check_branch
    %9 = sbr.rel (0) target = $region5
  $region4: #{gdc_forward.1} parent=0 // pred_region
    _
  $region5: #{gdc_forward.1} parent=0 // pred_fallthru
    _
  // Predicated region
  $region6: #{gdc_forward.1} parent=0 // pred_check
    _
  $region7: #{gdc_forward.1} parent=0 // pred_check_branch
    %11 = sbr.rel (0) target = $region9
  $region8: #{gdc_forward.1} parent=0 // pred_region
    _
  $region9: #{gdc_forward.1} parent=0 // pred_fallthru
    _
  // Predicated region
  $region10: #{gdc_forward.1} parent=0 // pred_check
    _
  $region11: #{gdc_forward.1} parent=0 // pred_check_branch
    %13 = sbr.rel (0) target = $region13
  $region12: #{gdc_forward.1} parent=0 // pred_region
    _
  $region13: #{gdc_forward.1} parent=0 // pred_fallthru
    _
  %v15 = vld [vmem:[%s0] sm:$0xff]
  %v16 = vld [vmem:[%s0 + $0x8] sm:$0xff]
  %v17 = vld [vmem:[%s0 + $0x10] sm:$0xff]
  %v18 = vld [vmem:[%s0 + $0x18] sm:$0xff]
  %v19 = vld [vmem:[%s0 + $0x20] sm:$0xff]
  %v20 = vld [vmem:[%s0 + $0x28] sm:$0xff]
  %v21 = vld [vmem:[%s0 + $0x30] sm:$0xff]
  %v22 = vld [vmem:[%s0 + $0x38] sm:$0xff]
  %v23 = vld [vmem:[%s0 + $0x40] sm:$0xff]
  %v24 = vld [vmem:[%s0 + $0x48] sm:$0xff]
  %v25 = vld [vmem:[%s0 + $0x50] sm:$0xff]
  %v26 = vld [vmem:[%s0 + $0x58] sm:$0xff]
  %v27 = vld [vmem:[%s0 + $0x60] sm:$0xff]
  %v28 = vld [vmem:[%s0 + $0x68] sm:$0xff]
  %v29 = vld [vmem:[%s0 + $0x70] sm:$0xff]
  %v30 = vld [vmem:[%s0 + $0x78] sm:$0xff]
  %v31 = vld [vmem:[%s0 + $0x80] sm:$0xff]
  %v32 = vld [vmem:[%s0 + $0x88] sm:$0xff]
  %v33 = vld [vmem:[%s0 + $0x90] sm:$0xff]
  %v34 = vld [vmem:[%s0 + $0x98] sm:$0xff]
  %v35 = vld [vmem:[%s0 + $0xa0] sm:$0xff]
  %v36 = vld [vmem:[%s0 + $0xa8] sm:$0xff]
  %v37 = vld [vmem:[%s0 + $0xb0] sm:$0xff]
  %v38 = vld [vmem:[%s0 + $0xb8] sm:$0xff]
  %v39 = vld [vmem:[%s0 + $0xc0] sm:$0xff]
  %v40 = vld [vmem:[%s0 + $0xc8] sm:$0xff]
  %v41 = vld [vmem:[%s0 + $0xd0] sm:$0xff]
  %v42 = vld [vmem:[%s0 + $0xd8] sm:$0xff]
  %v43 = vld [vmem:[%s0 + $0xe0] sm:$0xff]
  %v44 = vld [vmem:[%s0 + $0xe8] sm:$0xff]
  %v45 = vld [vmem:[%s0 + $0xf0] sm:$0xff]
  %v46 = vld [vmem:[%s0 + $0xf8] sm:$0xff]
  %v47 = vld [vmem:[%s0 + $0x100] sm:$0xff]
  %v48 = vld [vmem:[%s0 + $0x108] sm:$0xff]
  %v49 = vld [vmem:[%s0 + $0x110] sm:$0xff]
  %v50 = vld [vmem:[%s0 + $0x118] sm:$0xff]
  %v51 = vld [vmem:[%s0 + $0x120] sm:$0xff]
  %v52 = vld [vmem:[%s0 + $0x128] sm:$0xff]
  %v53 = vld [vmem:[%s0 + $0x130] sm:$0xff]
  %v54 = vld [vmem:[%s0 + $0x138] sm:$0xff]
  %v55 = vld [vmem:[%s0 + $0x140] sm:$0xff]
  %v56 = vld [vmem:[%s0 + $0x148] sm:$0xff]
  %v57 = vld [vmem:[%s0 + $0x150] sm:$0xff]
  %v58 = vld [vmem:[%s0 + $0x158] sm:$0xff]
  %v59 = vld [vmem:[%s0 + $0x160] sm:$0xff]
  %v60 = vld [vmem:[%s0 + $0x168] sm:$0xff]
  %v61 = vld [vmem:[%s0 + $0x170] sm:$0xff]
  %v62 = vld [vmem:[%s0 + $0x178] sm:$0xff]
  %v63 = vld [vmem:[%s0 + $0x180] sm:$0xff]
  %v64 = vld [vmem:[%s0 + $0x188] sm:$0xff]
  %v65 = vld [vmem:[%s0 + $0x190] sm:$0xff]
  %v66 = vld [vmem:[%s0 + $0x198] sm:$0xff]
  %v67 = vld [vmem:[%s0 + $0x1a0] sm:$0xff]
  %v68 = vld [vmem:[%s0 + $0x1a8] sm:$0xff]
  %v69 = vld [vmem:[%s0 + $0x1b0] sm:$0xff]
  %v70 = vld [vmem:[%s0 + $0x1b8] sm:$0xff]
  %v71 = vld [vmem:[%s0 + $0x1c0] sm:$0xff]
  %v72 = vld [vmem:[%s0 + $0x1c8] sm:$0xff]
  %v73 = vld [vmem:[%s0 + $0x1d0] sm:$0xff]
  %v74 = vld [vmem:[%s0 + $0x1d8] sm:$0xff]
  %v75 = vld [vmem:[%s0 + $0x1e0] sm:$0xff]
  %v76 = vld [vmem:[%s0 + $0x1e8] sm:$0xff]
  %v77 = vld [vmem:[%s0 + $0x1f0] sm:$0xff]
  %v78 = vld [vmem:[%s0 + $0x1f8] sm:$0xff]
  %v79 = vld [vmem:[%s0 + $0x200] sm:$0xff]
  %v80 = vld [vmem:[%s0 + $0x208] sm:$0xff]
  %v81 = vld [vmem:[%s0 + $0x210] sm:$0xff]
  %v82 = vld [vmem:[%s0 + $0x218] sm:$0xff]
  %v83 = vld [vmem:[%s0 + $0x220] sm:$0xff]
  %v84 = vld [vmem:[%s0 + $0x228] sm:$0xff]
  %v85 = vld [vmem:[%s0 + $0x230] sm:$0xff]
  %v86 = vld [vmem:[%s0 + $0x238] sm:$0xff]
  %v87 = vld [vmem:[%s0 + $0x240] sm:$0xff]
  %v88 = vld [vmem:[%s0 + $0x248] sm:$0xff]
  %v89 = vld [vmem:[%s0 + $0x250] sm:$0xff]
  %v90 = vld [vmem:[%s0 + $0x258] sm:$0xff]
  %v91 = vld [vmem:[%s0 + $0x260] sm:$0xff]
  %v92 = vld [vmem:[%s0 + $0x268] sm:$0xff]
  %v93 = vld [vmem:[%s0 + $0x270] sm:$0xff]
  %v94 = vld [vmem:[%s0 + $0x278] sm:$0xff]
  %v95 = vld [vmem:[%s0 + $0x280] sm:$0xff]
  %v96 = vld [vmem:[%s0 + $0x288] sm:$0xff]
  %v97 = vld [vmem:[%s0 + $0x290] sm:$0xff]
  %v98 = vld [vmem:[%s0 + $0x298] sm:$0xff]
  %v99 = vld [vmem:[%s0 + $0x2a0] sm:$0xff]
  %v100 = vld [vmem:[%s0 + $0x2a8] sm:$0xff]
  %v101 = vld [vmem:[%s0 + $0x2b0] sm:$0xff]
  %v102 = vld [vmem:[%s0 + $0x2b8] sm:$0xff]
  %v103 = vld [vmem:[%s0 + $0x2c0] sm:$0xff]
  %v104 = vld [vmem:[%s0 + $0x2c8] sm:$0xff]
  %v105 = vld [vmem:[%s0 + $0x2d0] sm:$0xff]
  %v106 = vld [vmem:[%s0 + $0x2d8] sm:$0xff]
  %v107 = vld [vmem:[%s0 + $0x2e0] sm:$0xff]
  %v108 = vld [vmem:[%s0 + $0x2e8] sm:$0xff]
  %v109 = vld [vmem:[%s0 + $0x2f0] sm:$0xff]
  %v110 = vld [vmem:[%s0 + $0x2f8] sm:$0xff]
  %v111 = vld [vmem:[%s0 + $0x300] sm:$0xff]
  %v112 = vld [vmem:[%s0 + $0x308] sm:$0xff]
  %v113 = vld [vmem:[%s0 + $0x310] sm:$0xff]
  %v114 = vld [vmem:[%s0 + $0x318] sm:$0xff]
  %v115 = vld [vmem:[%s0 + $0x320] sm:$0xff]
  %v116 = vld [vmem:[%s0 + $0x328] sm:$0xff]
  %v117 = vld [vmem:[%s0 + $0x330] sm:$0xff]
  %v118 = vld [vmem:[%s0 + $0x338] sm:$0xff]
  %v119 = vld [vmem:[%s0 + $0x340] sm:$0xff]
  %v120 = vld [vmem:[%s0 + $0x348] sm:$0xff]
  %v121 = vld [vmem:[%s0 + $0x350] sm:$0xff]
  %v122 = vld [vmem:[%s0 + $0x358] sm:$0xff]
  %v123 = vld [vmem:[%s0 + $0x360] sm:$0xff]
  %v124 = vld [vmem:[%s0 + $0x368] sm:$0xff]
  %v125 = vld [vmem:[%s0 + $0x370] sm:$0xff]
  %v126 = vld [vmem:[%s0 + $0x378] sm:$0xff]
  %v127 = vld [vmem:[%s0 + $0x380] sm:$0xff]
  %v128 = vld [vmem:[%s0 + $0x388] sm:$0xff]
  %v129 = vld [vmem:[%s0 + $0x390] sm:$0xff]
  %v130 = vld [vmem:[%s0 + $0x398] sm:$0xff]
  %v131 = vld [vmem:[%s0 + $0x3a0] sm:$0xff]
  %v132 = vld [vmem:[%s0 + $0x3a8] sm:$0xff]
  %v133 = vld [vmem:[%s0 + $0x3b0] sm:$0xff]
  %v134 = vld [vmem:[%s0 + $0x3b8] sm:$0xff]
  %v135 = vld [vmem:[%s0 + $0x3c0] sm:$0xff]
  %v136 = vld [vmem:[%s0 + $0x3c8] sm:$0xff]
  %v137 = vld [vmem:[%s0 + $0x3d0] sm:$0xff]
  %v138 = vld [vmem:[%s0 + $0x3d8] sm:$0xff]
  %v139 = vld [vmem:[%s0 + $0x3e0] sm:$0xff]
  %v140 = vld [vmem:[%s0 + $0x3e8] sm:$0xff]
  %v141 = vld [vmem:[%s0 + $0x3f0] sm:$0xff]
  %v142 = vld [vmem:[%s0 + $0x3f8] sm:$0xff]
  %v143 = vld [vmem:[%s0 + $0x400] sm:$0xff]
  %v144 = vld [vmem:[%s0 + $0x408] sm:$0xff]
  %v145 = vld [vmem:[%s0 + $0x410] sm:$0xff]
  %v146 = vld [vmem:[%s0 + $0x418] sm:$0xff]
  %v147 = vld [vmem:[%s0 + $0x420] sm:$0xff]
  %v148 = vld [vmem:[%s0 + $0x428] sm:$0xff]
  %v149 = vld [vmem:[%s0 + $0x430] sm:$0xff]
  %v150 = vld [vmem:[%s0 + $0x438] sm:$0xff]
  %v151 = vld [vmem:[%s0 + $0x440] sm:$0xff]
  %v152 = vld [vmem:[%s0 + $0x448] sm:$0xff]
  %v153 = vld [vmem:[%s0 + $0x450] sm:$0xff]
  %v154 = vld [vmem:[%s0 + $0x458] sm:$0xff]
  %v155 = vld [vmem:[%s0 + $0x460] sm:$0xff]
  %v156 = vld [vmem:[%s0 + $0x468] sm:$0xff]
  %v157 = vld [vmem:[%s0 + $0x470] sm:$0xff]
  %v158 = vld [vmem:[%s0 + $0x478] sm:$0xff]
  %v159 = vld [vmem:[%s0 + $0x480] sm:$0xff]
  %v160 = vld [vmem:[%s0 + $0x488] sm:$0xff]
  %v161 = vld [vmem:[%s0 + $0x490] sm:$0xff]
  %v162 = vld [vmem:[%s0 + $0x498] sm:$0xff]
  %v163 = vld [vmem:[%s0 + $0x4a0] sm:$0xff]
  %v164 = vld [vmem:[%s0 + $0x4a8] sm:$0xff]
  %v165 = vld [vmem:[%s0 + $0x4b0] sm:$0xff]
  %v166 = vld [vmem:[%s0 + $0x4b8] sm:$0xff]
  %v167 = vld [vmem:[%s0 + $0x4c0] sm:$0xff]
  %v168 = vld [vmem:[%s0 + $0x4c8] sm:$0xff]
  %v169 = vld [vmem:[%s0 + $0x4d0] sm:$0xff]
  %v170 = vld [vmem:[%s0 + $0x4d8] sm:$0xff]
  %v171 = vld [vmem:[%s0 + $0x4e0] sm:$0xff]
  %v172 = vld [vmem:[%s0 + $0x4e8] sm:$0xff]
  %v173 = vld [vmem:[%s0 + $0x4f0] sm:$0xff]
  %v174 = vld [vmem:[%s0 + $0x4f8] sm:$0xff]
  %v175 = vld [vmem:[%s0 + $0x500] sm:$0xff]
  %v176 = vld [vmem:[%s0 + $0x508] sm:$0xff]
  %v177 = vld [vmem:[%s0 + $0x510] sm:$0xff]
  %v178 = vld [vmem:[%s0 + $0x518] sm:$0xff]
  %v179 = vld [vmem:[%s0 + $0x520] sm:$0xff]
  %v180 = vld [vmem:[%s0 + $0x528] sm:$0xff]
  %v181 = vld [vmem:[%s0 + $0x530] sm:$0xff]
  %v182 = vld [vmem:[%s0 + $0x538] sm:$0xff]
  %v183 = vld [vmem:[%s0 + $0x540] sm:$0xff]
  %v184 = vld [vmem:[%s0 + $0x548] sm:$0xff]
  %v185 = vld [vmem:[%s0 + $0x550] sm:$0xff]
  %v186 = vld [vmem:[%s0 + $0x558] sm:$0xff]
  %v187 = vld [vmem:[%s0 + $0x560] sm:$0xff]
  %v188 = vld [vmem:[%s0 + $0x568] sm:$0xff]
  %v189 = vld [vmem:[%s0 + $0x570] sm:$0xff]
  %v190 = vld [vmem:[%s0 + $0x578] sm:$0xff]
  %v191 = vld [vmem:[%s0 + $0x580] sm:$0xff]
  %v192 = vld [vmem:[%s0 + $0x588] sm:$0xff]
  %v193 = vld [vmem:[%s0 + $0x590] sm:$0xff]
  %v194 = vld [vmem:[%s0 + $0x598] sm:$0xff]
  %v195 = vld [vmem:[%s0 + $0x5a0] sm:$0xff]
  %v196 = vld [vmem:[%s0 + $0x5a8] sm:$0xff]
  %v197 = vld [vmem:[%s0 + $0x5b0] sm:$0xff]
  %v198 = vld [vmem:[%s0 + $0x5b8] sm:$0xff]
  %v199 = vld [vmem:[%s0 + $0x5c0] sm:$0xff]
  %v200 = vld [vmem:[%s0 + $0x5c8] sm:$0xff]
  %v201 = vld [vmem:[%s0 + $0x5d0] sm:$0xff]
  %v202 = vld [vmem:[%s0 + $0x5d8] sm:$0xff]
  %v203 = vld [vmem:[%s0 + $0x5e0] sm:$0xff]
  %v204 = vld [vmem:[%s0 + $0x5e8] sm:$0xff]
  %v205 = vld [vmem:[%s0 + $0x5f0] sm:$0xff]
  %v206 = vld [vmem:[%s0 + $0x5f8] sm:$0xff]
  %v207 = vld [vmem:[%s0 + $0x600] sm:$0xff]
  %v208 = vld [vmem:[%s0 + $0x608] sm:$0xff]
  %v209 = vld [vmem:[%s0 + $0x610] sm:$0xff]
  %v210 = vld [vmem:[%s0 + $0x618] sm:$0xff]
  %v211 = vpack.c.bf16 %v15, %v15
  %v212 = vpack.c.bf16 %v16, %v16
  %v213 = vpack.c.bf16 %v17, %v17
  %v214 = vpack.c.bf16 %v18, %v18
  %v215 = vpack.c.bf16 %v19, %v19
  %v216 = vpack.c.bf16 %v20, %v20
  %v217 = vpack.c.bf16 %v21, %v21
  %v218 = vpack.c.bf16 %v22, %v22
  %v219 = vpack.c.bf16 %v23, %v23
  %v220 = vpack.c.bf16 %v24, %v24
  %v221 = vpack.c.bf16 %v25, %v25
  %v222 = vpack.c.bf16 %v26, %v26
  %v223 = vpack.c.bf16 %v27, %v27
  %v224 = vpack.c.bf16 %v28, %v28
  %v225 = vpack.c.bf16 %v29, %v29
  %v226 = vpack.c.bf16 %v30, %v30
  %v227 = vpack.c.bf16 %v31, %v31
  %v228 = vpack.c.bf16 %v32, %v32
  %v229 = vpack.c.bf16 %v33, %v33
  %v230 = vpack.c.bf16 %v34, %v34
  %v231 = vpack.c.bf16 %v35, %v35
  %v232 = vpack.c.bf16 %v36, %v36
  %v233 = vpack.c.bf16 %v37, %v37
  %v234 = vpack.c.bf16 %v38, %v38
  %v235 = vpack.c.bf16 %v39, %v39
  %v236 = vpack.c.bf16 %v40, %v40
  %v237 = vpack.c.bf16 %v41, %v41
  %v238 = vpack.c.bf16 %v42, %v42
  %v239 = vpack.c.bf16 %v43, %v43
  %v240 = vpack.c.bf16 %v44, %v44
  %v241 = vpack.c.bf16 %v45, %v45
  %v242 = vpack.c.bf16 %v46, %v46
  %v243 = vpack.c.bf16 %v47, %v47
  %v244 = vpack.c.bf16 %v48, %v48
  %v245 = vpack.c.bf16 %v49, %v49
  %v246 = vpack.c.bf16 %v50, %v50
  %v247 = vpack.c.bf16 %v51, %v51
  %v248 = vpack.c.bf16 %v52, %v52
  %v249 = vpack.c.bf16 %v53, %v53
  %v250 = vpack.c.bf16 %v54, %v54
  %v251 = vpack.c.bf16 %v55, %v55
  %v252 = vpack.c.bf16 %v56, %v56
  %v253 = vpack.c.bf16 %v57, %v57
  %v254 = vpack.c.bf16 %v58, %v58
  %v255 = vpack.c.bf16 %v59, %v59
  %v256 = vpack.c.bf16 %v60, %v60
  %v257 = vpack.c.bf16 %v61, %v61
  %v258 = vpack.c.bf16 %v62, %v62
  %v259 = vpack.c.bf16 %v63, %v63
  %v260 = vpack.c.bf16 %v64, %v64
  %v261 = vpack.c.bf16 %v65, %v65
  %v262 = vpack.c.bf16 %v66, %v66
  %v263 = vpack.c.bf16 %v67, %v67
  %v264 = vpack.c.bf16 %v68, %v68
  %v265 = vpack.c.bf16 %v69, %v69
  %v266 = vpack.c.bf16 %v70, %v70
  %v267 = vpack.c.bf16 %v71, %v71
  %v268 = vpack.c.bf16 %v72, %v72
  %v269 = vpack.c.bf16 %v73, %v73
  %v270 = vpack.c.bf16 %v74, %v74
  %v271 = vpack.c.bf16 %v75, %v75
  %v272 = vpack.c.bf16 %v76, %v76
  %v273 = vpack.c.bf16 %v77, %v77
  %v274 = vpack.c.bf16 %v78, %v78
  %v275 = vpack.c.bf16 %v79, %v79
  %v276 = vpack.c.bf16 %v80, %v80
  %v277 = vpack.c.bf16 %v81, %v81
  %v278 = vpack.c.bf16 %v82, %v82
  %v279 = vpack.c.bf16 %v83, %v83
  %v280 = vpack.c.bf16 %v84, %v84
  %v281 = vpack.c.bf16 %v85, %v85
  %v282 = vpack.c.bf16 %v86, %v86
  %v283 = vpack.c.bf16 %v87, %v87
  %v284 = vpack.c.bf16 %v88, %v88
  %v285 = vpack.c.bf16 %v89, %v89
  %v286 = vpack.c.bf16 %v90, %v90
  %v287 = vpack.c.bf16 %v91, %v91
  %v288 = vpack.c.bf16 %v92, %v92
  %v289 = vpack.c.bf16 %v93, %v93
  %v290 = vpack.c.bf16 %v94, %v94
  %v291 = vpack.c.bf16 %v95, %v95
  %v292 = vpack.c.bf16 %v96, %v96
  %v293 = vpack.c.bf16 %v97, %v97
  %v294 = vpack.c.bf16 %v98, %v98
  %v295 = vpack.c.bf16 %v99, %v99
  %v296 = vpack.c.bf16 %v100, %v100
  %v297 = vpack.c.bf16 %v101, %v101
  %v298 = vpack.c.bf16 %v102, %v102
  %v299 = vpack.c.bf16 %v103, %v103
  %v300 = vpack.c.bf16 %v104, %v104
  %v301 = vpack.c.bf16 %v105, %v105
  %v302 = vpack.c.bf16 %v106, %v106
  %v303 = vpack.c.bf16 %v107, %v107
  %v304 = vpack.c.bf16 %v108, %v108
  %v305 = vpack.c.bf16 %v109, %v109
  %v306 = vpack.c.bf16 %v110, %v110
  %v307 = vpack.c.bf16 %v111, %v111
  %v308 = vpack.c.bf16 %v112, %v112
  %v309 = vpack.c.bf16 %v113, %v113
  %v310 = vpack.c.bf16 %v114, %v114
  %v311 = vpack.c.bf16 %v115, %v115
  %v312 = vpack.c.bf16 %v116, %v116
  %v313 = vpack.c.bf16 %v117, %v117
  %v314 = vpack.c.bf16 %v118, %v118
  %v315 = vpack.c.bf16 %v119, %v119
  %v316 = vpack.c.bf16 %v120, %v120
  %v317 = vpack.c.bf16 %v121, %v121
  %v318 = vpack.c.bf16 %v122, %v122
  %v319 = vpack.c.bf16 %v123, %v123
  %v320 = vpack.c.bf16 %v124, %v124
  %v321 = vpack.c.bf16 %v125, %v125
  %v322 = vpack.c.bf16 %v126, %v126
  %v323 = vpack.c.bf16 %v127, %v127
  %v324 = vpack.c.bf16 %v128, %v128
  %v325 = vpack.c.bf16 %v129, %v129
  %v326 = vpack.c.bf16 %v130, %v130
  %v327 = vpack.c.bf16 %v131, %v131
  %v328 = vpack.c.bf16 %v132, %v132
  %v329 = vpack.c.bf16 %v133, %v133
  %v330 = vpack.c.bf16 %v134, %v134
  %v331 = vpack.c.bf16 %v135, %v135
  %v332 = vpack.c.bf16 %v136, %v136
  %v333 = vpack.c.bf16 %v137, %v137
  %v334 = vpack.c.bf16 %v138, %v138
  %v335 = vpack.c.bf16 %v139, %v139
  %v336 = vpack.c.bf16 %v140, %v140
  %v337 = vpack.c.bf16 %v141, %v141
  %v338 = vpack.c.bf16 %v142, %v142
  %v339 = vpack.c.bf16 %v143, %v143
  %v340 = vpack.c.bf16 %v144, %v144
  %v341 = vpack.c.bf16 %v145, %v145
  %v342 = vpack.c.bf16 %v146, %v146
  %v343 = vpack.c.bf16 %v147, %v147
  %v344 = vpack.c.bf16 %v148, %v148
  %v345 = vpack.c.bf16 %v149, %v149
  %v346 = vpack.c.bf16 %v150, %v150
  %v347 = vpack.c.bf16 %v151, %v151
  %v348 = vpack.c.bf16 %v152, %v152
  %v349 = vpack.c.bf16 %v153, %v153
  %v350 = vpack.c.bf16 %v154, %v154
  %v351 = vpack.c.bf16 %v155, %v155
  %v352 = vpack.c.bf16 %v156, %v156
  %v353 = vpack.c.bf16 %v157, %v157
  %v354 = vpack.c.bf16 %v158, %v158
  %v355 = vpack.c.bf16 %v159, %v159
  %v356 = vpack.c.bf16 %v160, %v160
  %v357 = vpack.c.bf16 %v161, %v161
  %v358 = vpack.c.bf16 %v162, %v162
  %v359 = vpack.c.bf16 %v163, %v163
  %v360 = vpack.c.bf16 %v164, %v164
  %v361 = vpack.c.bf16 %v165, %v165
  %v362 = vpack.c.bf16 %v166, %v166
  %v363 = vpack.c.bf16 %v167, %v167
  %v364 = vpack.c.bf16 %v168, %v168
  %v365 = vpack.c.bf16 %v169, %v169
  %v366 = vpack.c.bf16 %v170, %v170
  %v367 = vpack.c.bf16 %v171, %v171
  %v368 = vpack.c.bf16 %v172, %v172
  %v369 = vpack.c.bf16 %v173, %v173
  %v370 = vpack.c.bf16 %v174, %v174
  %v371 = vpack.c.bf16 %v175, %v175
  %v372 = vpack.c.bf16 %v176, %v176
  %v373 = vpack.c.bf16 %v177, %v177
  %v374 = vpack.c.bf16 %v178, %v178
  %v375 = vpack.c.bf16 %v179, %v179
  %v376 = vpack.c.bf16 %v180, %v180
  %v377 = vpack.c.bf16 %v181, %v181
  %v378 = vpack.c.bf16 %v182, %v182
  %v379 = vpack.c.bf16 %v183, %v183
  %v380 = vpack.c.bf16 %v184, %v184
  %v381 = vpack.c.bf16 %v185, %v185
  %v382 = vpack.c.bf16 %v186, %v186
  %v383 = vpack.c.bf16 %v187, %v187
  %v384 = vpack.c.bf16 %v188, %v188
  %v385 = vpack.c.bf16 %v189, %v189
  %v386 = vpack.c.bf16 %v190, %v190
  %v387 = vpack.c.bf16 %v191, %v191
  %v388 = vpack.c.bf16 %v192, %v192
  %v389 = vpack.c.bf16 %v193, %v193
  %v390 = vpack.c.bf16 %v194, %v194
  %v391 = vpack.c.bf16 %v195, %v195
  %v392 = vpack.c.bf16 %v196, %v196
  %v393 = vpack.c.bf16 %v197, %v197
  %v394 = vpack.c.bf16 %v198, %v198
  %v395 = vpack.c.bf16 %v199, %v199
  %v396 = vpack.c.bf16 %v200, %v200
  %v397 = vpack.c.bf16 %v201, %v201
  %v398 = vpack.c.bf16 %v202, %v202
  %v399 = vpack.c.bf16 %v203, %v203
  %v400 = vpack.c.bf16 %v204, %v204
  %v401 = vpack.c.bf16 %v205, %v205
  %v402 = vpack.c.bf16 %v206, %v206
  %v403 = vpack.c.bf16 %v207, %v207
  %v404 = vpack.c.bf16 %v208, %v208
  %v405 = vpack.c.bf16 %v209, %v209
  %v406 = vpack.c.bf16 %v210, %v210
  %v407 = vld [vmem:[%s1] sm:$0xf]
  %v408 = vld [vmem:[%s1 + $0x4] sm:$0xf]
  %v409 = vld [vmem:[%s1 + $0x8] sm:$0xf]
  %v410 = vld [vmem:[%s1 + $0xc] sm:$0xf]
  %v411 = vld [vmem:[%s1 + $0x10] sm:$0xf]
  %v412 = vld [vmem:[%s1 + $0x14] sm:$0xf]
  %v413 = vld [vmem:[%s1 + $0x18] sm:$0xf]
  %v414 = vld [vmem:[%s1 + $0x1c] sm:$0xf]
  %v415 = vld [vmem:[%s1 + $0x20] sm:$0xf]
  %v416 = vld [vmem:[%s1 + $0x24] sm:$0xf]
  %v417 = vld [vmem:[%s1 + $0x28] sm:$0xf]
  %v418 = vld [vmem:[%s1 + $0x2c] sm:$0xf]
  %v419 = vld [vmem:[%s1 + $0x30] sm:$0xf]
  %v420 = vld [vmem:[%s1 + $0x34] sm:$0xf]
  %v421 = vld [vmem:[%s1 + $0x38] sm:$0xf]
  %v422 = vld [vmem:[%s1 + $0x3c] sm:$0xf]
  %v423 = vld [vmem:[%s1 + $0x40] sm:$0xf]
  %v424 = vld [vmem:[%s1 + $0x44] sm:$0xf]
  %v425 = vld [vmem:[%s1 + $0x48] sm:$0xf]
  %v426 = vld [vmem:[%s1 + $0x4c] sm:$0xf]
  %v427 = vld [vmem:[%s1 + $0x50] sm:$0xf]
  %v428 = vld [vmem:[%s1 + $0x54] sm:$0xf]
  %v429 = vld [vmem:[%s1 + $0x58] sm:$0xf]
  %v430 = vld [vmem:[%s1 + $0x5c] sm:$0xf]
  %v431 = vld [vmem:[%s1 + $0x60] sm:$0xf]
  %v432 = vld [vmem:[%s1 + $0x64] sm:$0xf]
  %v433 = vld [vmem:[%s1 + $0x68] sm:$0xf]
  %v434 = vld [vmem:[%s1 + $0x6c] sm:$0xf]
  %v435 = vld [vmem:[%s1 + $0x70] sm:$0xf]
  %v436 = vld [vmem:[%s1 + $0x74] sm:$0xf]
  %v437 = vld [vmem:[%s1 + $0x78] sm:$0xf]
  %v438 = vld [vmem:[%s1 + $0x7c] sm:$0xf]
  %v439 = vld [vmem:[%s1 + $0x80] sm:$0xf]
  %v440 = vld [vmem:[%s1 + $0x84] sm:$0xf]
  %v441 = vld [vmem:[%s1 + $0x88] sm:$0xf]
  %v442 = vld [vmem:[%s1 + $0x8c] sm:$0xf]
  %v443 = vld [vmem:[%s1 + $0x90] sm:$0xf]
  %v444 = vld [vmem:[%s1 + $0x94] sm:$0xf]
  %v445 = vld [vmem:[%s1 + $0x98] sm:$0xf]
  %v446 = vld [vmem:[%s1 + $0x9c] sm:$0xf]
  %v447 = vld [vmem:[%s1 + $0xa0] sm:$0xf]
  %v448 = vld [vmem:[%s1 + $0xa4] sm:$0xf]
  %v449 = vld [vmem:[%s1 + $0xa8] sm:$0xf]
  %v450 = vld [vmem:[%s1 + $0xac] sm:$0xf]
  %v451 = vld [vmem:[%s1 + $0xb0] sm:$0xf]
  %v452 = vld [vmem:[%s1 + $0xb4] sm:$0xf]
  %v453 = vld [vmem:[%s1 + $0xb8] sm:$0xf]
  %v454 = vld [vmem:[%s1 + $0xbc] sm:$0xf]
  %v455 = vld [vmem:[%s1 + $0xc0] sm:$0xf]
  %v456 = vld [vmem:[%s1 + $0xc4] sm:$0xf]
  %v457 = vld [vmem:[%s1 + $0xc8] sm:$0xf]
  %v458 = vld [vmem:[%s1 + $0xcc] sm:$0xf]
  %v459 = vld [vmem:[%s1 + $0xd0] sm:$0xf]
  %v460 = vld [vmem:[%s1 + $0xd4] sm:$0xf]
  %v461 = vld [vmem:[%s1 + $0xd8] sm:$0xf]
  %v462 = vld [vmem:[%s1 + $0xdc] sm:$0xf]
  %v463 = vld [vmem:[%s1 + $0xe0] sm:$0xf]
  %v464 = vld [vmem:[%s1 + $0xe4] sm:$0xf]
  %v465 = vld [vmem:[%s1 + $0xe8] sm:$0xf]
  %v466 = vld [vmem:[%s1 + $0xec] sm:$0xf]
  %v467 = vld [vmem:[%s1 + $0xf0] sm:$0xf]
  %v468 = vld [vmem:[%s1 + $0xf4] sm:$0xf]
  %v469 = vld [vmem:[%s1 + $0xf8] sm:$0xf]
  %v470 = vld [vmem:[%s1 + $0xfc] sm:$0xf]
  %v471 = vld [vmem:[%s1 + $0x100] sm:$0xf]
  %v472 = vld [vmem:[%s1 + $0x104] sm:$0xf]
  %v473 = vld [vmem:[%s1 + $0x108] sm:$0xf]
  %v474 = vld [vmem:[%s1 + $0x10c] sm:$0xf]
  %v475 = vld [vmem:[%s1 + $0x110] sm:$0xf]
  %v476 = vld [vmem:[%s1 + $0x114] sm:$0xf]
  %v477 = vld [vmem:[%s1 + $0x118] sm:$0xf]
  %v478 = vld [vmem:[%s1 + $0x11c] sm:$0xf]
  %v479 = vld [vmem:[%s1 + $0x120] sm:$0xf]
  %v480 = vld [vmem:[%s1 + $0x124] sm:$0xf]
  %v481 = vld [vmem:[%s1 + $0x128] sm:$0xf]
  %v482 = vld [vmem:[%s1 + $0x12c] sm:$0xf]
  %v483 = vld [vmem:[%s1 + $0x130] sm:$0xf]
  %v484 = vld [vmem:[%s1 + $0x134] sm:$0xf]
  %v485 = vld [vmem:[%s1 + $0x138] sm:$0xf]
  %v486 = vld [vmem:[%s1 + $0x13c] sm:$0xf]
  %v487 = vld [vmem:[%s1 + $0x140] sm:$0xf]
  %v488 = vld [vmem:[%s1 + $0x144] sm:$0xf]
  %v489 = vld [vmem:[%s1 + $0x148] sm:$0xf]
  %v490 = vld [vmem:[%s1 + $0x14c] sm:$0xf]
  %v491 = vld [vmem:[%s1 + $0x150] sm:$0xf]
  %v492 = vld [vmem:[%s1 + $0x154] sm:$0xf]
  %v493 = vld [vmem:[%s1 + $0x158] sm:$0xf]
  %v494 = vld [vmem:[%s1 + $0x15c] sm:$0xf]
  %v495 = vld [vmem:[%s1 + $0x160] sm:$0xf]
  %v496 = vld [vmem:[%s1 + $0x164] sm:$0xf]
  %v497 = vld [vmem:[%s1 + $0x168] sm:$0xf]
  %v498 = vld [vmem:[%s1 + $0x16c] sm:$0xf]
  %v499 = vld [vmem:[%s1 + $0x170] sm:$0xf]
  %v500 = vld [vmem:[%s1 + $0x174] sm:$0xf]
  %v501 = vld [vmem:[%s1 + $0x178] sm:$0xf]
  %v502 = vld [vmem:[%s1 + $0x17c] sm:$0xf]
  %v503 = vld [vmem:[%s1 + $0x180] sm:$0xf]
  %v504 = vld [vmem:[%s1 + $0x184] sm:$0xf]
  %v505 = vld [vmem:[%s1 + $0x188] sm:$0xf]
  %v506 = vld [vmem:[%s1 + $0x18c] sm:$0xf]
  %v507 = vld [vmem:[%s1 + $0x190] sm:$0xf]
  %v508 = vld [vmem:[%s1 + $0x194] sm:$0xf]
  %v509 = vld [vmem:[%s1 + $0x198] sm:$0xf]
  %v510 = vld [vmem:[%s1 + $0x19c] sm:$0xf]
  %v511 = vld [vmem:[%s1 + $0x1a0] sm:$0xf]
  %v512 = vld [vmem:[%s1 + $0x1a4] sm:$0xf]
  %v513 = vld [vmem:[%s1 + $0x1a8] sm:$0xf]
  %v514 = vld [vmem:[%s1 + $0x1ac] sm:$0xf]
  %v515 = vld [vmem:[%s1 + $0x1b0] sm:$0xf]
  %v516 = vld [vmem:[%s1 + $0x1b4] sm:$0xf]
  %v517 = vld [vmem:[%s1 + $0x1b8] sm:$0xf]
  %v518 = vld [vmem:[%s1 + $0x1bc] sm:$0xf]
  %v519 = vld [vmem:[%s1 + $0x1c0] sm:$0xf]
  %v520 = vld [vmem:[%s1 + $0x1c4] sm:$0xf]
  %v521 = vld [vmem:[%s1 + $0x1c8] sm:$0xf]
  %v522 = vld [vmem:[%s1 + $0x1cc] sm:$0xf]
  %v523 = vld [vmem:[%s1 + $0x1d0] sm:$0xf]
  %v524 = vld [vmem:[%s1 + $0x1d4] sm:$0xf]
  %v525 = vld [vmem:[%s1 + $0x1d8] sm:$0xf]
  %v526 = vld [vmem:[%s1 + $0x1dc] sm:$0xf]
  %v527 = vld [vmem:[%s1 + $0x1e0] sm:$0xf]
  %v528 = vld [vmem:[%s1 + $0x1e4] sm:$0xf]
  %v529 = vld [vmem:[%s1 + $0x1e8] sm:$0xf]
  %v530 = vld [vmem:[%s1 + $0x1ec] sm:$0xf]
  %v531 = vld [vmem:[%s1 + $0x1f0] sm:$0xf]
  %v532 = vld [vmem:[%s1 + $0x1f4] sm:$0xf]
  %v533 = vld [vmem:[%s1 + $0x1f8] sm:$0xf]
  %v534 = vld [vmem:[%s1 + $0x1fc] sm:$0xf]
  %v535 = vld [vmem:[%s1 + $0x200] sm:$0xf]
  %v536 = vld [vmem:[%s1 + $0x204] sm:$0xf]
  %v537 = vld [vmem:[%s1 + $0x208] sm:$0xf]
  %v538 = vld [vmem:[%s1 + $0x20c] sm:$0xf]
  %v539 = vld [vmem:[%s1 + $0x210] sm:$0xf]
  %v540 = vld [vmem:[%s1 + $0x214] sm:$0xf]
  %v541 = vld [vmem:[%s1 + $0x218] sm:$0xf]
  %v542 = vld [vmem:[%s1 + $0x21c] sm:$0xf]
  %v543 = vld [vmem:[%s1 + $0x220] sm:$0xf]
  %v544 = vld [vmem:[%s1 + $0x224] sm:$0xf]
  %v545 = vld [vmem:[%s1 + $0x228] sm:$0xf]
  %v546 = vld [vmem:[%s1 + $0x22c] sm:$0xf]
  %v547 = vld [vmem:[%s1 + $0x230] sm:$0xf]
  %v548 = vld [vmem:[%s1 + $0x234] sm:$0xf]
  %v549 = vld [vmem:[%s1 + $0x238] sm:$0xf]
  %v550 = vld [vmem:[%s1 + $0x23c] sm:$0xf]
  %v551 = vld [vmem:[%s1 + $0x240] sm:$0xf]
  %v552 = vld [vmem:[%s1 + $0x244] sm:$0xf]
  %v553 = vld [vmem:[%s1 + $0x248] sm:$0xf]
  %v554 = vld [vmem:[%s1 + $0x24c] sm:$0xf]
  %v555 = vld [vmem:[%s1 + $0x250] sm:$0xf]
  %v556 = vld [vmem:[%s1 + $0x254] sm:$0xf]
  %v557 = vld [vmem:[%s1 + $0x258] sm:$0xf]
  %v558 = vld [vmem:[%s1 + $0x25c] sm:$0xf]
  %v559 = vld [vmem:[%s1 + $0x260] sm:$0xf]
  %v560 = vld [vmem:[%s1 + $0x264] sm:$0xf]
  %v561 = vld [vmem:[%s1 + $0x268] sm:$0xf]
  %v562 = vld [vmem:[%s1 + $0x26c] sm:$0xf]
  %v563 = vld [vmem:[%s1 + $0x270] sm:$0xf]
  %v564 = vld [vmem:[%s1 + $0x274] sm:$0xf]
  %v565 = vld [vmem:[%s1 + $0x278] sm:$0xf]
  %v566 = vld [vmem:[%s1 + $0x27c] sm:$0xf]
  %v567 = vld [vmem:[%s1 + $0x280] sm:$0xf]
  %v568 = vld [vmem:[%s1 + $0x284] sm:$0xf]
  %v569 = vld [vmem:[%s1 + $0x288] sm:$0xf]
  %v570 = vld [vmem:[%s1 + $0x28c] sm:$0xf]
  %v571 = vld [vmem:[%s1 + $0x290] sm:$0xf]
  %v572 = vld [vmem:[%s1 + $0x294] sm:$0xf]
  %v573 = vld [vmem:[%s1 + $0x298] sm:$0xf]
  %v574 = vld [vmem:[%s1 + $0x29c] sm:$0xf]
  %v575 = vld [vmem:[%s1 + $0x2a0] sm:$0xf]
  %v576 = vld [vmem:[%s1 + $0x2a4] sm:$0xf]
  %v577 = vld [vmem:[%s1 + $0x2a8] sm:$0xf]
  %v578 = vld [vmem:[%s1 + $0x2ac] sm:$0xf]
  %v579 = vld [vmem:[%s1 + $0x2b0] sm:$0xf]
  %v580 = vld [vmem:[%s1 + $0x2b4] sm:$0xf]
  %v581 = vld [vmem:[%s1 + $0x2b8] sm:$0xf]
  %v582 = vld [vmem:[%s1 + $0x2bc] sm:$0xf]
  %v583 = vld [vmem:[%s1 + $0x2c0] sm:$0xf]
  %v584 = vld [vmem:[%s1 + $0x2c4] sm:$0xf]
  %v585 = vld [vmem:[%s1 + $0x2c8] sm:$0xf]
  %v586 = vld [vmem:[%s1 + $0x2cc] sm:$0xf]
  %v587 = vld [vmem:[%s1 + $0x2d0] sm:$0xf]
  %v588 = vld [vmem:[%s1 + $0x2d4] sm:$0xf]
  %v589 = vld [vmem:[%s1 + $0x2d8] sm:$0xf]
  %v590 = vld [vmem:[%s1 + $0x2dc] sm:$0xf]
  %v591 = vld [vmem:[%s1 + $0x2e0] sm:$0xf]
  %v592 = vld [vmem:[%s1 + $0x2e4] sm:$0xf]
  %v593 = vld [vmem:[%s1 + $0x2e8] sm:$0xf]
  %v594 = vld [vmem:[%s1 + $0x2ec] sm:$0xf]
  %v595 = vld [vmem:[%s1 + $0x2f0] sm:$0xf]
  %v596 = vld [vmem:[%s1 + $0x2f4] sm:$0xf]
  %v597 = vld [vmem:[%s1 + $0x2f8] sm:$0xf]
  %v598 = vld [vmem:[%s1 + $0x2fc] sm:$0xf]
  %v599 = vld [vmem:[%s1 + $0x300] sm:$0xf]
  %v600 = vld [vmem:[%s1 + $0x304] sm:$0xf]
  %v601 = vld [vmem:[%s1 + $0x308] sm:$0xf]
  %v602 = vld [vmem:[%s1 + $0x30c] sm:$0xf]
  %v603 = vld [vmem:[%s1 + $0x310] sm:$0xf]
  %v604 = vld [vmem:[%s1 + $0x314] sm:$0xf]
  %v605 = vld [vmem:[%s1 + $0x318] sm:$0xf]
  %v606 = vld [vmem:[%s1 + $0x31c] sm:$0xf]
  %v607 = vld [vmem:[%s1 + $0x320] sm:$0xf]
  %v608 = vld [vmem:[%s1 + $0x324] sm:$0xf]
  %v609 = vld [vmem:[%s1 + $0x328] sm:$0xf]
  %v610 = vld [vmem:[%s1 + $0x32c] sm:$0xf]
  %v611 = vld [vmem:[%s1 + $0x330] sm:$0xf]
  %v612 = vld [vmem:[%s1 + $0x334] sm:$0xf]
  %v613 = vld [vmem:[%s1 + $0x338] sm:$0xf]
  %v614 = vld [vmem:[%s1 + $0x33c] sm:$0xf]
  %v615 = vld [vmem:[%s1 + $0x340] sm:$0xf]
  %v616 = vld [vmem:[%s1 + $0x344] sm:$0xf]
  %v617 = vld [vmem:[%s1 + $0x348] sm:$0xf]
  %v618 = vld [vmem:[%s1 + $0x34c] sm:$0xf]
  %v619 = vld [vmem:[%s1 + $0x350] sm:$0xf]
  %v620 = vld [vmem:[%s1 + $0x354] sm:$0xf]
  %v621 = vld [vmem:[%s1 + $0x358] sm:$0xf]
  %v622 = vld [vmem:[%s1 + $0x35c] sm:$0xf]
  %v623 = vld [vmem:[%s1 + $0x360] sm:$0xf]
  %v624 = vld [vmem:[%s1 + $0x364] sm:$0xf]
  %v625 = vld [vmem:[%s1 + $0x368] sm:$0xf]
  %v626 = vld [vmem:[%s1 + $0x36c] sm:$0xf]
  %v627 = vld [vmem:[%s1 + $0x370] sm:$0xf]
  %v628 = vld [vmem:[%s1 + $0x374] sm:$0xf]
  %v629 = vld [vmem:[%s1 + $0x378] sm:$0xf]
  %v630 = vld [vmem:[%s1 + $0x37c] sm:$0xf]
  %v631 = vld [vmem:[%s1 + $0x380] sm:$0xf]
  %v632 = vld [vmem:[%s1 + $0x384] sm:$0xf]
  %v633 = vld [vmem:[%s1 + $0x388] sm:$0xf]
  %v634 = vld [vmem:[%s1 + $0x38c] sm:$0xf]
  %v635 = vld [vmem:[%s1 + $0x390] sm:$0xf]
  %v636 = vld [vmem:[%s1 + $0x394] sm:$0xf]
  %v637 = vld [vmem:[%s1 + $0x398] sm:$0xf]
  %v638 = vld [vmem:[%s1 + $0x39c] sm:$0xf]
  %v639 = vld [vmem:[%s1 + $0x3a0] sm:$0xf]
  %v640 = vld [vmem:[%s1 + $0x3a4] sm:$0xf]
  %v641 = vld [vmem:[%s1 + $0x3a8] sm:$0xf]
  %v642 = vld [vmem:[%s1 + $0x3ac] sm:$0xf]
  %v643 = vld [vmem:[%s1 + $0x3b0] sm:$0xf]
  %v644 = vld [vmem:[%s1 + $0x3b4] sm:$0xf]
  %v645 = vld [vmem:[%s1 + $0x3b8] sm:$0xf]
  %v646 = vld [vmem:[%s1 + $0x3bc] sm:$0xf]
  %v647 = vld [vmem:[%s1 + $0x3c0] sm:$0xf]
  %v648 = vld [vmem:[%s1 + $0x3c4] sm:$0xf]
  %v649 = vld [vmem:[%s1 + $0x3c8] sm:$0xf]
  %v650 = vld [vmem:[%s1 + $0x3cc] sm:$0xf]
  %v651 = vld [vmem:[%s1 + $0x3d0] sm:$0xf]
  %v652 = vld [vmem:[%s1 + $0x3d4] sm:$0xf]
  %v653 = vld [vmem:[%s1 + $0x3d8] sm:$0xf]
  %v654 = vld [vmem:[%s1 + $0x3dc] sm:$0xf]
  %v655 = vld [vmem:[%s1 + $0x3e0] sm:$0xf]
  %v656 = vld [vmem:[%s1 + $0x3e4] sm:$0xf]
  %v657 = vld [vmem:[%s1 + $0x3e8] sm:$0xf]
  %v658 = vld [vmem:[%s1 + $0x3ec] sm:$0xf]
  %v659 = vld [vmem:[%s1 + $0x3f0] sm:$0xf]
  %v660 = vld [vmem:[%s1 + $0x3f4] sm:$0xf]
  %v661 = vld [vmem:[%s1 + $0x3f8] sm:$0xf]
  %v662 = vld [vmem:[%s1 + $0x3fc] sm:$0xf]
  %v663 = vld [vmem:[%s1 + $0x400] sm:$0xf]
  %v664 = vld [vmem:[%s1 + $0x404] sm:$0xf]
  %v665 = vld [vmem:[%s1 + $0x408] sm:$0xf]
  %v666 = vld [vmem:[%s1 + $0x40c] sm:$0xf]
  %v667 = vld [vmem:[%s1 + $0x410] sm:$0xf]
  %v668 = vld [vmem:[%s1 + $0x414] sm:$0xf]
  %v669 = vld [vmem:[%s1 + $0x418] sm:$0xf]
  %v670 = vld [vmem:[%s1 + $0x41c] sm:$0xf]
  %v671 = vld [vmem:[%s1 + $0x420] sm:$0xf]
  %v672 = vld [vmem:[%s1 + $0x424] sm:$0xf]
  %v673 = vld [vmem:[%s1 + $0x428] sm:$0xf]
  %v674 = vld [vmem:[%s1 + $0x42c] sm:$0xf]
  %v675 = vld [vmem:[%s1 + $0x430] sm:$0xf]
  %v676 = vld [vmem:[%s1 + $0x434] sm:$0xf]
  %v677 = vld [vmem:[%s1 + $0x438] sm:$0xf]
  %v678 = vld [vmem:[%s1 + $0x43c] sm:$0xf]
  %v679 = vld [vmem:[%s1 + $0x440] sm:$0xf]
  %v680 = vld [vmem:[%s1 + $0x444] sm:$0xf]
  %v681 = vld [vmem:[%s1 + $0x448] sm:$0xf]
  %v682 = vld [vmem:[%s1 + $0x44c] sm:$0xf]
  %v683 = vld [vmem:[%s1 + $0x450] sm:$0xf]
  %v684 = vld [vmem:[%s1 + $0x454] sm:$0xf]
  %v685 = vld [vmem:[%s1 + $0x458] sm:$0xf]
  %v686 = vld [vmem:[%s1 + $0x45c] sm:$0xf]
  %v687 = vld [vmem:[%s1 + $0x460] sm:$0xf]
  %v688 = vld [vmem:[%s1 + $0x464] sm:$0xf]
  %v689 = vld [vmem:[%s1 + $0x468] sm:$0xf]
  %v690 = vld [vmem:[%s1 + $0x46c] sm:$0xf]
  %v691 = vld [vmem:[%s1 + $0x470] sm:$0xf]
  %v692 = vld [vmem:[%s1 + $0x474] sm:$0xf]
  %v693 = vld [vmem:[%s1 + $0x478] sm:$0xf]
  %v694 = vld [vmem:[%s1 + $0x47c] sm:$0xf]
  %v695 = vld [vmem:[%s1 + $0x480] sm:$0xf]
  %v696 = vld [vmem:[%s1 + $0x484] sm:$0xf]
  %v697 = vld [vmem:[%s1 + $0x488] sm:$0xf]
  %v698 = vld [vmem:[%s1 + $0x48c] sm:$0xf]
  %v699 = vld [vmem:[%s1 + $0x490] sm:$0xf]
  %v700 = vld [vmem:[%s1 + $0x494] sm:$0xf]
  %v701 = vld [vmem:[%s1 + $0x498] sm:$0xf]
  %v702 = vld [vmem:[%s1 + $0x49c] sm:$0xf]
  %v703 = vld [vmem:[%s1 + $0x4a0] sm:$0xf]
  %v704 = vld [vmem:[%s1 + $0x4a4] sm:$0xf]
  %v705 = vld [vmem:[%s1 + $0x4a8] sm:$0xf]
  %v706 = vld [vmem:[%s1 + $0x4ac] sm:$0xf]
  %v707 = vld [vmem:[%s1 + $0x4b0] sm:$0xf]
  %v708 = vld [vmem:[%s1 + $0x4b4] sm:$0xf]
  %v709 = vld [vmem:[%s1 + $0x4b8] sm:$0xf]
  %v710 = vld [vmem:[%s1 + $0x4bc] sm:$0xf]
  %v711 = vld [vmem:[%s1 + $0x4c0] sm:$0xf]
  %v712 = vld [vmem:[%s1 + $0x4c4] sm:$0xf]
  %v713 = vld [vmem:[%s1 + $0x4c8] sm:$0xf]
  %v714 = vld [vmem:[%s1 + $0x4cc] sm:$0xf]
  %v715 = vld [vmem:[%s1 + $0x4d0] sm:$0xf]
  %v716 = vld [vmem:[%s1 + $0x4d4] sm:$0xf]
  %v717 = vld [vmem:[%s1 + $0x4d8] sm:$0xf]
  %v718 = vld [vmem:[%s1 + $0x4dc] sm:$0xf]
  %v719 = vld [vmem:[%s1 + $0x4e0] sm:$0xf]
  %v720 = vld [vmem:[%s1 + $0x4e4] sm:$0xf]
  %v721 = vld [vmem:[%s1 + $0x4e8] sm:$0xf]
  %v722 = vld [vmem:[%s1 + $0x4ec] sm:$0xf]
  %v723 = vld [vmem:[%s1 + $0x4f0] sm:$0xf]
  %v724 = vld [vmem:[%s1 + $0x4f4] sm:$0xf]
  %v725 = vld [vmem:[%s1 + $0x4f8] sm:$0xf]
  %v726 = vld [vmem:[%s1 + $0x4fc] sm:$0xf]
  %v727 = vld [vmem:[%s1 + $0x500] sm:$0xf]
  %v728 = vld [vmem:[%s1 + $0x504] sm:$0xf]
  %v729 = vld [vmem:[%s1 + $0x508] sm:$0xf]
  %v730 = vld [vmem:[%s1 + $0x50c] sm:$0xf]
  %v731 = vld [vmem:[%s1 + $0x510] sm:$0xf]
  %v732 = vld [vmem:[%s1 + $0x514] sm:$0xf]
  %v733 = vld [vmem:[%s1 + $0x518] sm:$0xf]
  %v734 = vld [vmem:[%s1 + $0x51c] sm:$0xf]
  %v735 = vld [vmem:[%s1 + $0x520] sm:$0xf]
  %v736 = vld [vmem:[%s1 + $0x524] sm:$0xf]
  %v737 = vld [vmem:[%s1 + $0x528] sm:$0xf]
  %v738 = vld [vmem:[%s1 + $0x52c] sm:$0xf]
  %v739 = vld [vmem:[%s1 + $0x530] sm:$0xf]
  %v740 = vld [vmem:[%s1 + $0x534] sm:$0xf]
  %v741 = vld [vmem:[%s1 + $0x538] sm:$0xf]
  %v742 = vld [vmem:[%s1 + $0x53c] sm:$0xf]
  %v743 = vld [vmem:[%s1 + $0x540] sm:$0xf]
  %v744 = vld [vmem:[%s1 + $0x544] sm:$0xf]
  %v745 = vld [vmem:[%s1 + $0x548] sm:$0xf]
  %v746 = vld [vmem:[%s1 + $0x54c] sm:$0xf]
  %v747 = vld [vmem:[%s1 + $0x550] sm:$0xf]
  %v748 = vld [vmem:[%s1 + $0x554] sm:$0xf]
  %v749 = vld [vmem:[%s1 + $0x558] sm:$0xf]
  %v750 = vld [vmem:[%s1 + $0x55c] sm:$0xf]
  %v751 = vld [vmem:[%s1 + $0x560] sm:$0xf]
  %v752 = vld [vmem:[%s1 + $0x564] sm:$0xf]
  %v753 = vld [vmem:[%s1 + $0x568] sm:$0xf]
  %v754 = vld [vmem:[%s1 + $0x56c] sm:$0xf]
  %v755 = vld [vmem:[%s1 + $0x570] sm:$0xf]
  %v756 = vld [vmem:[%s1 + $0x574] sm:$0xf]
  %v757 = vld [vmem:[%s1 + $0x578] sm:$0xf]
  %v758 = vld [vmem:[%s1 + $0x57c] sm:$0xf]
  %v759 = vld [vmem:[%s1 + $0x580] sm:$0xf]
  %v760 = vld [vmem:[%s1 + $0x584] sm:$0xf]
  %v761 = vld [vmem:[%s1 + $0x588] sm:$0xf]
  %v762 = vld [vmem:[%s1 + $0x58c] sm:$0xf]
  %v763 = vld [vmem:[%s1 + $0x590] sm:$0xf]
  %v764 = vld [vmem:[%s1 + $0x594] sm:$0xf]
  %v765 = vld [vmem:[%s1 + $0x598] sm:$0xf]
  %v766 = vld [vmem:[%s1 + $0x59c] sm:$0xf]
  %v767 = vld [vmem:[%s1 + $0x5a0] sm:$0xf]
  %v768 = vld [vmem:[%s1 + $0x5a4] sm:$0xf]
  %v769 = vld [vmem:[%s1 + $0x5a8] sm:$0xf]
  %v770 = vld [vmem:[%s1 + $0x5ac] sm:$0xf]
  %v771 = vld [vmem:[%s1 + $0x5b0] sm:$0xf]
  %v772 = vld [vmem:[%s1 + $0x5b4] sm:$0xf]
  %v773 = vld [vmem:[%s1 + $0x5b8] sm:$0xf]
  %v774 = vld [vmem:[%s1 + $0x5bc] sm:$0xf]
  %v775 = vld [vmem:[%s1 + $0x5c0] sm:$0xf]
  %v776 = vld [vmem:[%s1 + $0x5c4] sm:$0xf]
  %v777 = vld [vmem:[%s1 + $0x5c8] sm:$0xf]
  %v778 = vld [vmem:[%s1 + $0x5cc] sm:$0xf]
  %v779 = vld [vmem:[%s1 + $0x5d0] sm:$0xf]
  %v780 = vld [vmem:[%s1 + $0x5d4] sm:$0xf]
  %v781 = vld [vmem:[%s1 + $0x5d8] sm:$0xf]
  %v782 = vld [vmem:[%s1 + $0x5dc] sm:$0xf]
  %v783 = vld [vmem:[%s1 + $0x5e0] sm:$0xf]
  %v784 = vld [vmem:[%s1 + $0x5e4] sm:$0xf]
  %v785 = vld [vmem:[%s1 + $0x5e8] sm:$0xf]
  %v786 = vld [vmem:[%s1 + $0x5ec] sm:$0xf]
  %v787 = vld [vmem:[%s1 + $0x5f0] sm:$0xf]
  %v788 = vld [vmem:[%s1 + $0x5f4] sm:$0xf]
  %v789 = vld [vmem:[%s1 + $0x5f8] sm:$0xf]
  %v790 = vld [vmem:[%s1 + $0x5fc] sm:$0xf]
  %v791 = vld [vmem:[%s1 + $0x600] sm:$0xf]
  %v792 = vld [vmem:[%s1 + $0x604] sm:$0xf]
  %v793 = vld [vmem:[%s1 + $0x608] sm:$0xf]
  %v794 = vld [vmem:[%s1 + $0x60c] sm:$0xf]
  %v795 = vld [vmem:[%s1 + $0x610] sm:$0xf]
  %v796 = vld [vmem:[%s1 + $0x614] sm:$0xf]
  %v797 = vld [vmem:[%s1 + $0x618] sm:$0xf]
  %v798 = vld [vmem:[%s1 + $0x61c] sm:$0xf]
  %v799 = vld [vmem:[%s1 + $0x620] sm:$0xf]
  %v800 = vld [vmem:[%s1 + $0x624] sm:$0xf]
  %v801 = vld [vmem:[%s1 + $0x628] sm:$0xf]
  %v802 = vld [vmem:[%s1 + $0x62c] sm:$0xf]
  %v803 = vld [vmem:[%s1 + $0x630] sm:$0xf]
  %v804 = vld [vmem:[%s1 + $0x634] sm:$0xf]
  %v805 = vld [vmem:[%s1 + $0x638] sm:$0xf]
  %v806 = vld [vmem:[%s1 + $0x63c] sm:$0xf]
  %v807 = vld [vmem:[%s1 + $0x640] sm:$0xf]
  %v808 = vld [vmem:[%s1 + $0x644] sm:$0xf]
  %v809 = vld [vmem:[%s1 + $0x648] sm:$0xf]
  %v810 = vld [vmem:[%s1 + $0x64c] sm:$0xf]
  %v811 = vld [vmem:[%s1 + $0x650] sm:$0xf]
  %v812 = vld [vmem:[%s1 + $0x654] sm:$0xf]
  %v813 = vld [vmem:[%s1 + $0x658] sm:$0xf]
  %v814 = vld [vmem:[%s1 + $0x65c] sm:$0xf]
  %v815 = vld [vmem:[%s1 + $0x660] sm:$0xf]
  %v816 = vld [vmem:[%s1 + $0x664] sm:$0xf]
  %v817 = vld [vmem:[%s1 + $0x668] sm:$0xf]
  %v818 = vld [vmem:[%s1 + $0x66c] sm:$0xf]
  %v819 = vld [vmem:[%s1 + $0x670] sm:$0xf]
  %v820 = vld [vmem:[%s1 + $0x674] sm:$0xf]
  %v821 = vld [vmem:[%s1 + $0x678] sm:$0xf]
  %v822 = vld [vmem:[%s1 + $0x67c] sm:$0xf]
  %v823 = vld [vmem:[%s1 + $0x680] sm:$0xf]
  %v824 = vld [vmem:[%s1 + $0x684] sm:$0xf]
  %v825 = vld [vmem:[%s1 + $0x688] sm:$0xf]
  %v826 = vld [vmem:[%s1 + $0x68c] sm:$0xf]
  %v827 = vld [vmem:[%s1 + $0x690] sm:$0xf]
  %v828 = vld [vmem:[%s1 + $0x694] sm:$0xf]
  %v829 = vld [vmem:[%s1 + $0x698] sm:$0xf]
  %v830 = vld [vmem:[%s1 + $0x69c] sm:$0xf]
  %v831 = vld [vmem:[%s1 + $0x6a0] sm:$0xf]
  %v832 = vld [vmem:[%s1 + $0x6a4] sm:$0xf]
  %v833 = vld [vmem:[%s1 + $0x6a8] sm:$0xf]
  %v834 = vld [vmem:[%s1 + $0x6ac] sm:$0xf]
  %v835 = vld [vmem:[%s1 + $0x6b0] sm:$0xf]
  %v836 = vld [vmem:[%s1 + $0x6b4] sm:$0xf]
  %v837 = vld [vmem:[%s1 + $0x6b8] sm:$0xf]
  %v838 = vld [vmem:[%s1 + $0x6bc] sm:$0xf]
  %v839 = vld [vmem:[%s1 + $0x6c0] sm:$0xf]
  %v840 = vld [vmem:[%s1 + $0x6c4] sm:$0xf]
  %v841 = vld [vmem:[%s1 + $0x6c8] sm:$0xf]
  %v842 = vld [vmem:[%s1 + $0x6cc] sm:$0xf]
  %v843 = vld [vmem:[%s1 + $0x6d0] sm:$0xf]
  %v844 = vld [vmem:[%s1 + $0x6d4] sm:$0xf]
  %v845 = vld [vmem:[%s1 + $0x6d8] sm:$0xf]
  %v846 = vld [vmem:[%s1 + $0x6dc] sm:$0xf]
  %v847 = vld [vmem:[%s1 + $0x6e0] sm:$0xf]
  %v848 = vld [vmem:[%s1 + $0x6e4] sm:$0xf]
  %v849 = vld [vmem:[%s1 + $0x6e8] sm:$0xf]
  %v850 = vld [vmem:[%s1 + $0x6ec] sm:$0xf]
  %v851 = vld [vmem:[%s1 + $0x6f0] sm:$0xf]
  %v852 = vld [vmem:[%s1 + $0x6f4] sm:$0xf]
  %v853 = vld [vmem:[%s1 + $0x6f8] sm:$0xf]
  %v854 = vld [vmem:[%s1 + $0x6fc] sm:$0xf]
  %v855 = vld [vmem:[%s1 + $0x700] sm:$0xf]
  %v856 = vld [vmem:[%s1 + $0x704] sm:$0xf]
  %v857 = vld [vmem:[%s1 + $0x708] sm:$0xf]
  %v858 = vld [vmem:[%s1 + $0x70c] sm:$0xf]
  %v859 = vld [vmem:[%s1 + $0x710] sm:$0xf]
  %v860 = vld [vmem:[%s1 + $0x714] sm:$0xf]
  %v861 = vld [vmem:[%s1 + $0x718] sm:$0xf]
  %v862 = vld [vmem:[%s1 + $0x71c] sm:$0xf]
  %v863 = vld [vmem:[%s1 + $0x720] sm:$0xf]
  %v864 = vld [vmem:[%s1 + $0x724] sm:$0xf]
  %v865 = vld [vmem:[%s1 + $0x728] sm:$0xf]
  %v866 = vld [vmem:[%s1 + $0x72c] sm:$0xf]
  %v867 = vld [vmem:[%s1 + $0x730] sm:$0xf]
  %v868 = vld [vmem:[%s1 + $0x734] sm:$0xf]
  %v869 = vld [vmem:[%s1 + $0x738] sm:$0xf]
  %v870 = vld [vmem:[%s1 + $0x73c] sm:$0xf]
  %v871 = vld [vmem:[%s1 + $0x740] sm:$0xf]
  %v872 = vld [vmem:[%s1 + $0x744] sm:$0xf]
  %v873 = vld [vmem:[%s1 + $0x748] sm:$0xf]
  %v874 = vld [vmem:[%s1 + $0x74c] sm:$0xf]
  %v875 = vld [vmem:[%s1 + $0x750] sm:$0xf]
  %v876 = vld [vmem:[%s1 + $0x754] sm:$0xf]
  %v877 = vld [vmem:[%s1 + $0x758] sm:$0xf]
  %v878 = vld [vmem:[%s1 + $0x75c] sm:$0xf]
  %v879 = vld [vmem:[%s1 + $0x760] sm:$0xf]
  %v880 = vld [vmem:[%s1 + $0x764] sm:$0xf]
  %v881 = vld [vmem:[%s1 + $0x768] sm:$0xf]
  %v882 = vld [vmem:[%s1 + $0x76c] sm:$0xf]
  %v883 = vld [vmem:[%s1 + $0x770] sm:$0xf]
  %v884 = vld [vmem:[%s1 + $0x774] sm:$0xf]
  %v885 = vld [vmem:[%s1 + $0x778] sm:$0xf]
  %v886 = vld [vmem:[%s1 + $0x77c] sm:$0xf]
  %v887 = vld [vmem:[%s1 + $0x780] sm:$0xf]
  %v888 = vld [vmem:[%s1 + $0x784] sm:$0xf]
  %v889 = vld [vmem:[%s1 + $0x788] sm:$0xf]
  %v890 = vld [vmem:[%s1 + $0x78c] sm:$0xf]
  %v891 = vld [vmem:[%s1 + $0x790] sm:$0xf]
  %v892 = vld [vmem:[%s1 + $0x794] sm:$0xf]
  %v893 = vld [vmem:[%s1 + $0x798] sm:$0xf]
  %v894 = vld [vmem:[%s1 + $0x79c] sm:$0xf]
  %v895 = vld [vmem:[%s1 + $0x7a0] sm:$0xf]
  %v896 = vld [vmem:[%s1 + $0x7a4] sm:$0xf]
  %v897 = vld [vmem:[%s1 + $0x7a8] sm:$0xf]
  %v898 = vld [vmem:[%s1 + $0x7ac] sm:$0xf]
  %v899 = vld [vmem:[%s1 + $0x7b0] sm:$0xf]
  %v900 = vld [vmem:[%s1 + $0x7b4] sm:$0xf]
  %v901 = vld [vmem:[%s1 + $0x7b8] sm:$0xf]
  %v902 = vld [vmem:[%s1 + $0x7bc] sm:$0xf]
  %v903 = vld [vmem:[%s1 + $0x7c0] sm:$0xf]
  %v904 = vld [vmem:[%s1 + $0x7c4] sm:$0xf]
  %v905 = vld [vmem:[%s1 + $0x7c8] sm:$0xf]
  %v906 = vld [vmem:[%s1 + $0x7cc] sm:$0xf]
  %v907 = vld [vmem:[%s1 + $0x7d0] sm:$0xf]
  %v908 = vld [vmem:[%s1 + $0x7d4] sm:$0xf]
  %v909 = vld [vmem:[%s1 + $0x7d8] sm:$0xf]
  %v910 = vld [vmem:[%s1 + $0x7dc] sm:$0xf]
  %v911 = vld [vmem:[%s1 + $0x7e0] sm:$0xf]
  %v912 = vld [vmem:[%s1 + $0x7e4] sm:$0xf]
  %v913 = vld [vmem:[%s1 + $0x7e8] sm:$0xf]
  %v914 = vld [vmem:[%s1 + $0x7ec] sm:$0xf]
  %v915 = vld [vmem:[%s1 + $0x7f0] sm:$0xf]
  %v916 = vld [vmem:[%s1 + $0x7f4] sm:$0xf]
  %v917 = vld [vmem:[%s1 + $0x7f8] sm:$0xf]
  %v918 = vld [vmem:[%s1 + $0x7fc] sm:$0xf]
  %v919 = vld [vmem:[%s1 + $0x800] sm:$0xf]
  %v920 = vld [vmem:[%s1 + $0x804] sm:$0xf]
  %v921 = vld [vmem:[%s1 + $0x808] sm:$0xf]
  %v922 = vld [vmem:[%s1 + $0x80c] sm:$0xf]
  %v923 = vld [vmem:[%s1 + $0x810] sm:$0xf]
  %v924 = vld [vmem:[%s1 + $0x814] sm:$0xf]
  %v925 = vld [vmem:[%s1 + $0x818] sm:$0xf]
  %v926 = vld [vmem:[%s1 + $0x81c] sm:$0xf]
  %v927 = vld [vmem:[%s1 + $0x820] sm:$0xf]
  %v928 = vld [vmem:[%s1 + $0x824] sm:$0xf]
  %v929 = vld [vmem:[%s1 + $0x828] sm:$0xf]
  %v930 = vld [vmem:[%s1 + $0x82c] sm:$0xf]
  %v931 = vld [vmem:[%s1 + $0x830] sm:$0xf]
  %v932 = vld [vmem:[%s1 + $0x834] sm:$0xf]
  %v933 = vld [vmem:[%s1 + $0x838] sm:$0xf]
  %v934 = vld [vmem:[%s1 + $0x83c] sm:$0xf]
  %v935 = vld [vmem:[%s1 + $0x840] sm:$0xf]
  %v936 = vld [vmem:[%s1 + $0x844] sm:$0xf]
  %v937 = vld [vmem:[%s1 + $0x848] sm:$0xf]
  %v938 = vld [vmem:[%s1 + $0x84c] sm:$0xf]
  %v939 = vld [vmem:[%s1 + $0x850] sm:$0xf]
  %v940 = vld [vmem:[%s1 + $0x854] sm:$0xf]
  %v941 = vld [vmem:[%s1 + $0x858] sm:$0xf]
  %v942 = vld [vmem:[%s1 + $0x85c] sm:$0xf]
  %v943 = vld [vmem:[%s1 + $0x860] sm:$0xf]
  %v944 = vld [vmem:[%s1 + $0x864] sm:$0xf]
  %v945 = vld [vmem:[%s1 + $0x868] sm:$0xf]
  %v946 = vld [vmem:[%s1 + $0x86c] sm:$0xf]
  %v947 = vld [vmem:[%s1 + $0x870] sm:$0xf]
  %v948 = vld [vmem:[%s1 + $0x874] sm:$0xf]
  %v949 = vld [vmem:[%s1 + $0x878] sm:$0xf]
  %v950 = vld [vmem:[%s1 + $0x87c] sm:$0xf]
  %v951 = vld [vmem:[%s1 + $0x880] sm:$0xf]
  %v952 = vld [vmem:[%s1 + $0x884] sm:$0xf]
  %v953 = vld [vmem:[%s1 + $0x888] sm:$0xf]
  %v954 = vld [vmem:[%s1 + $0x88c] sm:$0xf]
  %v955 = vld [vmem:[%s1 + $0x890] sm:$0xf]
  %v956 = vld [vmem:[%s1 + $0x894] sm:$0xf]
  %v957 = vld [vmem:[%s1 + $0x898] sm:$0xf]
  %v958 = vld [vmem:[%s1 + $0x89c] sm:$0xf]
  %v959 = vld [vmem:[%s1 + $0x8a0] sm:$0xf]
  %v960 = vld [vmem:[%s1 + $0x8a4] sm:$0xf]
  %v961 = vld [vmem:[%s1 + $0x8a8] sm:$0xf]
  %v962 = vld [vmem:[%s1 + $0x8ac] sm:$0xf]
  %v963 = vld [vmem:[%s1 + $0x8b0] sm:$0xf]
  %v964 = vld [vmem:[%s1 + $0x8b4] sm:$0xf]
  %v965 = vld [vmem:[%s1 + $0x8b8] sm:$0xf]
  %v966 = vld [vmem:[%s1 + $0x8bc] sm:$0xf]
  %v967 = vld [vmem:[%s1 + $0x8c0] sm:$0xf]
  %v968 = vld [vmem:[%s1 + $0x8c4] sm:$0xf]
  %v969 = vld [vmem:[%s1 + $0x8c8] sm:$0xf]
  %v970 = vld [vmem:[%s1 + $0x8cc] sm:$0xf]
  %v971 = vld [vmem:[%s1 + $0x8d0] sm:$0xf]
  %v972 = vld [vmem:[%s1 + $0x8d4] sm:$0xf]
  %v973 = vld [vmem:[%s1 + $0x8d8] sm:$0xf]
  %v974 = vld [vmem:[%s1 + $0x8dc] sm:$0xf]
  %v975 = vld [vmem:[%s1 + $0x8e0] sm:$0xf]
  %v976 = vld [vmem:[%s1 + $0x8e4] sm:$0xf]
  %v977 = vld [vmem:[%s1 + $0x8e8] sm:$0xf]
  %v978 = vld [vmem:[%s1 + $0x8ec] sm:$0xf]
  %v979 = vld [vmem:[%s1 + $0x8f0] sm:$0xf]
  %v980 = vld [vmem:[%s1 + $0x8f4] sm:$0xf]
  %v981 = vld [vmem:[%s1 + $0x8f8] sm:$0xf]
  %v982 = vld [vmem:[%s1 + $0x8fc] sm:$0xf]
  %v983 = vld [vmem:[%s1 + $0x900] sm:$0xf]
  %v984 = vld [vmem:[%s1 + $0x904] sm:$0xf]
  %v985 = vld [vmem:[%s1 + $0x908] sm:$0xf]
  %v986 = vld [vmem:[%s1 + $0x90c] sm:$0xf]
  %v987 = vld [vmem:[%s1 + $0x910] sm:$0xf]
  %v988 = vld [vmem:[%s1 + $0x914] sm:$0xf]
  %v989 = vld [vmem:[%s1 + $0x918] sm:$0xf]
  %v990 = vld [vmem:[%s1 + $0x91c] sm:$0xf]
  %v991 = vld [vmem:[%s1 + $0x920] sm:$0xf]
  %v992 = vld [vmem:[%s1 + $0x924] sm:$0xf]
  %v993 = vld [vmem:[%s1 + $0x928] sm:$0xf]
  %v994 = vld [vmem:[%s1 + $0x92c] sm:$0xf]
  %v995 = vld [vmem:[%s1 + $0x930] sm:$0xf]
  %v996 = vld [vmem:[%s1 + $0x934] sm:$0xf]
  %v997 = vld [vmem:[%s1 + $0x938] sm:$0xf]
  %v998 = vld [vmem:[%s1 + $0x93c] sm:$0xf]
  %v999 = vld [vmem:[%s1 + $0x940] sm:$0xf]
  %v1000 = vld [vmem:[%s1 + $0x944] sm:$0xf]
  %v1001 = vld [vmem:[%s1 + $0x948] sm:$0xf]
  %v1002 = vld [vmem:[%s1 + $0x94c] sm:$0xf]
  %v1003 = vld [vmem:[%s1 + $0x950] sm:$0xf]
  %v1004 = vld [vmem:[%s1 + $0x954] sm:$0xf]
  %v1005 = vld [vmem:[%s1 + $0x958] sm:$0xf]
  %v1006 = vld [vmem:[%s1 + $0x95c] sm:$0xf]
  %v1007 = vld [vmem:[%s1 + $0x960] sm:$0xf]
  %v1008 = vld [vmem:[%s1 + $0x964] sm:$0xf]
  %v1009 = vld [vmem:[%s1 + $0x968] sm:$0xf]
  %v1010 = vld [vmem:[%s1 + $0x96c] sm:$0xf]
  %v1011 = vld [vmem:[%s1 + $0x970] sm:$0xf]
  %v1012 = vld [vmem:[%s1 + $0x974] sm:$0xf]
  %v1013 = vld [vmem:[%s1 + $0x978] sm:$0xf]
  %v1014 = vld [vmem:[%s1 + $0x97c] sm:$0xf]
  %v1015 = vld [vmem:[%s1 + $0x980] sm:$0xf]
  %v1016 = vld [vmem:[%s1 + $0x984] sm:$0xf]
  %v1017 = vld [vmem:[%s1 + $0x988] sm:$0xf]
  %v1018 = vld [vmem:[%s1 + $0x98c] sm:$0xf]
  %v1019 = vld [vmem:[%s1 + $0x990] sm:$0xf]
  %v1020 = vld [vmem:[%s1 + $0x994] sm:$0xf]
  %v1021 = vld [vmem:[%s1 + $0x998] sm:$0xf]
  %v1022 = vld [vmem:[%s1 + $0x99c] sm:$0xf]
  %v1023 = vld [vmem:[%s1 + $0x9a0] sm:$0xf]
  %v1024 = vld [vmem:[%s1 + $0x9a4] sm:$0xf]
  %v1025 = vld [vmem:[%s1 + $0x9a8] sm:$0xf]
  %v1026 = vld [vmem:[%s1 + $0x9ac] sm:$0xf]
  %v1027 = vld [vmem:[%s1 + $0x9b0] sm:$0xf]
  %v1028 = vld [vmem:[%s1 + $0x9b4] sm:$0xf]
  %v1029 = vld [vmem:[%s1 + $0x9b8] sm:$0xf]
  %v1030 = vld [vmem:[%s1 + $0x9bc] sm:$0xf]
  %v1031 = vld [vmem:[%s1 + $0x9c0] sm:$0xf]
  %v1032 = vld [vmem:[%s1 + $0x9c4] sm:$0xf]
  %v1033 = vld [vmem:[%s1 + $0x9c8] sm:$0xf]
  %v1034 = vld [vmem:[%s1 + $0x9cc] sm:$0xf]
  %v1035 = vld [vmem:[%s1 + $0x9d0] sm:$0xf]
  %v1036 = vld [vmem:[%s1 + $0x9d4] sm:$0xf]
  %v1037 = vld [vmem:[%s1 + $0x9d8] sm:$0xf]
  %v1038 = vld [vmem:[%s1 + $0x9dc] sm:$0xf]
  %v1039 = vld [vmem:[%s1 + $0x9e0] sm:$0xf]
  %v1040 = vld [vmem:[%s1 + $0x9e4] sm:$0xf]
  %v1041 = vld [vmem:[%s1 + $0x9e8] sm:$0xf]
  %v1042 = vld [vmem:[%s1 + $0x9ec] sm:$0xf]
  %v1043 = vld [vmem:[%s1 + $0x9f0] sm:$0xf]
  %v1044 = vld [vmem:[%s1 + $0x9f4] sm:$0xf]
  %v1045 = vld [vmem:[%s1 + $0x9f8] sm:$0xf]
  %v1046 = vld [vmem:[%s1 + $0x9fc] sm:$0xf]
  %v1047 = vld [vmem:[%s1 + $0xa00] sm:$0xf]
  %v1048 = vld [vmem:[%s1 + $0xa04] sm:$0xf]
  %v1049 = vld [vmem:[%s1 + $0xa08] sm:$0xf]
  %v1050 = vld [vmem:[%s1 + $0xa0c] sm:$0xf]
  %v1051 = vld [vmem:[%s1 + $0xa10] sm:$0xf]
  %v1052 = vld [vmem:[%s1 + $0xa14] sm:$0xf]
  %v1053 = vld [vmem:[%s1 + $0xa18] sm:$0xf]
  %v1054 = vld [vmem:[%s1 + $0xa1c] sm:$0xf]
  %v1055 = vld [vmem:[%s1 + $0xa20] sm:$0xf]
  %v1056 = vld [vmem:[%s1 + $0xa24] sm:$0xf]
  %v1057 = vld [vmem:[%s1 + $0xa28] sm:$0xf]
  %v1058 = vld [vmem:[%s1 + $0xa2c] sm:$0xf]
  %v1059 = vld [vmem:[%s1 + $0xa30] sm:$0xf]
  %v1060 = vld [vmem:[%s1 + $0xa34] sm:$0xf]
  %v1061 = vld [vmem:[%s1 + $0xa38] sm:$0xf]
  %v1062 = vld [vmem:[%s1 + $0xa3c] sm:$0xf]
  %v1063 = vld [vmem:[%s1 + $0xa40] sm:$0xf]
  %v1064 = vld [vmem:[%s1 + $0xa44] sm:$0xf]
  %v1065 = vld [vmem:[%s1 + $0xa48] sm:$0xf]
  %v1066 = vld [vmem:[%s1 + $0xa4c] sm:$0xf]
  %v1067 = vld [vmem:[%s1 + $0xa50] sm:$0xf]
  %v1068 = vld [vmem:[%s1 + $0xa54] sm:$0xf]
  %v1069 = vld [vmem:[%s1 + $0xa58] sm:$0xf]
  %v1070 = vld [vmem:[%s1 + $0xa5c] sm:$0xf]
  %v1071 = vld [vmem:[%s1 + $0xa60] sm:$0xf]
  %v1072 = vld [vmem:[%s1 + $0xa64] sm:$0xf]
  %v1073 = vld [vmem:[%s1 + $0xa68] sm:$0xf]
  %v1074 = vld [vmem:[%s1 + $0xa6c] sm:$0xf]
  %v1075 = vld [vmem:[%s1 + $0xa70] sm:$0xf]
  %v1076 = vld [vmem:[%s1 + $0xa74] sm:$0xf]
  %v1077 = vld [vmem:[%s1 + $0xa78] sm:$0xf]
  %v1078 = vld [vmem:[%s1 + $0xa7c] sm:$0xf]
  %v1079 = vld [vmem:[%s1 + $0xa80] sm:$0xf]
  %v1080 = vld [vmem:[%s1 + $0xa84] sm:$0xf]
  %v1081 = vld [vmem:[%s1 + $0xa88] sm:$0xf]
  %v1082 = vld [vmem:[%s1 + $0xa8c] sm:$0xf]
  %v1083 = vld [vmem:[%s1 + $0xa90] sm:$0xf]
  %v1084 = vld [vmem:[%s1 + $0xa94] sm:$0xf]
  %v1085 = vld [vmem:[%s1 + $0xa98] sm:$0xf]
  %v1086 = vld [vmem:[%s1 + $0xa9c] sm:$0xf]
  %v1087 = vld [vmem:[%s1 + $0xaa0] sm:$0xf]
  %v1088 = vld [vmem:[%s1 + $0xaa4] sm:$0xf]
  %v1089 = vld [vmem:[%s1 + $0xaa8] sm:$0xf]
  %v1090 = vld [vmem:[%s1 + $0xaac] sm:$0xf]
  %v1091 = vld [vmem:[%s1 + $0xab0] sm:$0xf]
  %v1092 = vld [vmem:[%s1 + $0xab4] sm:$0xf]
  %v1093 = vld [vmem:[%s1 + $0xab8] sm:$0xf]
  %v1094 = vld [vmem:[%s1 + $0xabc] sm:$0xf]
  %v1095 = vld [vmem:[%s1 + $0xac0] sm:$0xf]
  %v1096 = vld [vmem:[%s1 + $0xac4] sm:$0xf]
  %v1097 = vld [vmem:[%s1 + $0xac8] sm:$0xf]
  %v1098 = vld [vmem:[%s1 + $0xacc] sm:$0xf]
  %v1099 = vld [vmem:[%s1 + $0xad0] sm:$0xf]
  %v1100 = vld [vmem:[%s1 + $0xad4] sm:$0xf]
  %v1101 = vld [vmem:[%s1 + $0xad8] sm:$0xf]
  %v1102 = vld [vmem:[%s1 + $0xadc] sm:$0xf]
  %v1103 = vld [vmem:[%s1 + $0xae0] sm:$0xf]
  %v1104 = vld [vmem:[%s1 + $0xae4] sm:$0xf]
  %v1105 = vld [vmem:[%s1 + $0xae8] sm:$0xf]
  %v1106 = vld [vmem:[%s1 + $0xaec] sm:$0xf]
  %v1107 = vld [vmem:[%s1 + $0xaf0] sm:$0xf]
  %v1108 = vld [vmem:[%s1 + $0xaf4] sm:$0xf]
  %v1109 = vld [vmem:[%s1 + $0xaf8] sm:$0xf]
  %v1110 = vld [vmem:[%s1 + $0xafc] sm:$0xf]
  %v1111 = vld [vmem:[%s1 + $0xb00] sm:$0xf]
  %v1112 = vld [vmem:[%s1 + $0xb04] sm:$0xf]
  %v1113 = vld [vmem:[%s1 + $0xb08] sm:$0xf]
  %v1114 = vld [vmem:[%s1 + $0xb0c] sm:$0xf]
  %v1115 = vld [vmem:[%s1 + $0xb10] sm:$0xf]
  %v1116 = vld [vmem:[%s1 + $0xb14] sm:$0xf]
  %v1117 = vld [vmem:[%s1 + $0xb18] sm:$0xf]
  %v1118 = vld [vmem:[%s1 + $0xb1c] sm:$0xf]
  %v1119 = vld [vmem:[%s1 + $0xb20] sm:$0xf]
  %v1120 = vld [vmem:[%s1 + $0xb24] sm:$0xf]
  %v1121 = vld [vmem:[%s1 + $0xb28] sm:$0xf]
  %v1122 = vld [vmem:[%s1 + $0xb2c] sm:$0xf]
  %v1123 = vld [vmem:[%s1 + $0xb30] sm:$0xf]
  %v1124 = vld [vmem:[%s1 + $0xb34] sm:$0xf]
  %v1125 = vld [vmem:[%s1 + $0xb38] sm:$0xf]
  %v1126 = vld [vmem:[%s1 + $0xb3c] sm:$0xf]
  %v1127 = vld [vmem:[%s1 + $0xb40] sm:$0xf]
  %v1128 = vld [vmem:[%s1 + $0xb44] sm:$0xf]
  %v1129 = vld [vmem:[%s1 + $0xb48] sm:$0xf]
  %v1130 = vld [vmem:[%s1 + $0xb4c] sm:$0xf]
  %v1131 = vld [vmem:[%s1 + $0xb50] sm:$0xf]
  %v1132 = vld [vmem:[%s1 + $0xb54] sm:$0xf]
  %v1133 = vld [vmem:[%s1 + $0xb58] sm:$0xf]
  %v1134 = vld [vmem:[%s1 + $0xb5c] sm:$0xf]
  %v1135 = vld [vmem:[%s1 + $0xb60] sm:$0xf]
  %v1136 = vld [vmem:[%s1 + $0xb64] sm:$0xf]
  %v1137 = vld [vmem:[%s1 + $0xb68] sm:$0xf]
  %v1138 = vld [vmem:[%s1 + $0xb6c] sm:$0xf]
  %v1139 = vld [vmem:[%s1 + $0xb70] sm:$0xf]
  %v1140 = vld [vmem:[%s1 + $0xb74] sm:$0xf]
  %v1141 = vld [vmem:[%s1 + $0xb78] sm:$0xf]
  %v1142 = vld [vmem:[%s1 + $0xb7c] sm:$0xf]
  %v1143 = vld [vmem:[%s1 + $0xb80] sm:$0xf]
  %v1144 = vld [vmem:[%s1 + $0xb84] sm:$0xf]
  %v1145 = vld [vmem:[%s1 + $0xb88] sm:$0xf]
  %v1146 = vld [vmem:[%s1 + $0xb8c] sm:$0xf]
  %v1147 = vld [vmem:[%s1 + $0xb90] sm:$0xf]
  %v1148 = vld [vmem:[%s1 + $0xb94] sm:$0xf]
  %v1149 = vld [vmem:[%s1 + $0xb98] sm:$0xf]
  %v1150 = vld [vmem:[%s1 + $0xb9c] sm:$0xf]
  %v1151 = vld [vmem:[%s1 + $0xba0] sm:$0xf]
  %v1152 = vld [vmem:[%s1 + $0xba4] sm:$0xf]
  %v1153 = vld [vmem:[%s1 + $0xba8] sm:$0xf]
  %v1154 = vld [vmem:[%s1 + $0xbac] sm:$0xf]
  %v1155 = vld [vmem:[%s1 + $0xbb0] sm:$0xf]
  %v1156 = vld [vmem:[%s1 + $0xbb4] sm:$0xf]
  %v1157 = vld [vmem:[%s1 + $0xbb8] sm:$0xf]
  %v1158 = vld [vmem:[%s1 + $0xbbc] sm:$0xf]
  %v1159 = vld [vmem:[%s1 + $0xbc0] sm:$0xf]
  %v1160 = vld [vmem:[%s1 + $0xbc4] sm:$0xf]
  %v1161 = vld [vmem:[%s1 + $0xbc8] sm:$0xf]
  %v1162 = vld [vmem:[%s1 + $0xbcc] sm:$0xf]
  %v1163 = vld [vmem:[%s1 + $0xbd0] sm:$0xf]
  %v1164 = vld [vmem:[%s1 + $0xbd4] sm:$0xf]
  %v1165 = vld [vmem:[%s1 + $0xbd8] sm:$0xf]
  %v1166 = vld [vmem:[%s1 + $0xbdc] sm:$0xf]
  %v1167 = vld [vmem:[%s1 + $0xbe0] sm:$0xf]
  %v1168 = vld [vmem:[%s1 + $0xbe4] sm:$0xf]
  %v1169 = vld [vmem:[%s1 + $0xbe8] sm:$0xf]
  %v1170 = vld [vmem:[%s1 + $0xbec] sm:$0xf]
  %v1171 = vld [vmem:[%s1 + $0xbf0] sm:$0xf]
  %v1172 = vld [vmem:[%s1 + $0xbf4] sm:$0xf]
  %v1173 = vld [vmem:[%s1 + $0xbf8] sm:$0xf]
  %v1174 = vld [vmem:[%s1 + $0xbfc] sm:$0xf]
  %v1175 = vld [vmem:[%s1 + $0xc00] sm:$0xf]
  %v1176 = vld [vmem:[%s1 + $0xc04] sm:$0xf]
  %v1177 = vld [vmem:[%s1 + $0xc08] sm:$0xf]
  %v1178 = vld [vmem:[%s1 + $0xc0c] sm:$0xf]
  %v1179 = vld [vmem:[%s1 + $0xc10] sm:$0xf]
  %v1180 = vld [vmem:[%s1 + $0xc14] sm:$0xf]
  %v1181 = vld [vmem:[%s1 + $0xc18] sm:$0xf]
  %v1182 = vld [vmem:[%s1 + $0xc1c] sm:$0xf]
  %v1183 = vld [vmem:[%s1 + $0xc20] sm:$0xf]
  %v1184 = vld [vmem:[%s1 + $0xc24] sm:$0xf]
  %v1185 = vld [vmem:[%s1 + $0xc28] sm:$0xf]
  %v1186 = vld [vmem:[%s1 + $0xc2c] sm:$0xf]
  %v1187 = vld [vmem:[%s1 + $0xc30] sm:$0xf]
  %v1188 = vld [vmem:[%s1 + $0xc34] sm:$0xf]
  %v1189 = vld [vmem:[%s1 + $0xc38] sm:$0xf]
  %v1190 = vld [vmem:[%s1 + $0xc3c] sm:$0xf]
  %v1191 = vld [vmem:[%s1 + $0xc40] sm:$0xf]
  %v1192 = vld [vmem:[%s1 + $0xc44] sm:$0xf]
  %v1193 = vld [vmem:[%s1 + $0xc48] sm:$0xf]
  %v1194 = vld [vmem:[%s1 + $0xc4c] sm:$0xf]
  %v1195 = vld [vmem:[%s1 + $0xc50] sm:$0xf]
  %v1196 = vld [vmem:[%s1 + $0xc54] sm:$0xf]
  %v1197 = vld [vmem:[%s1 + $0xc58] sm:$0xf]
  %v1198 = vld [vmem:[%s1 + $0xc5c] sm:$0xf]
  %v1199 = vld [vmem:[%s1 + $0xc60] sm:$0xf]
  %v1200 = vld [vmem:[%s1 + $0xc64] sm:$0xf]
  %v1201 = vld [vmem:[%s1 + $0xc68] sm:$0xf]
  %v1202 = vld [vmem:[%s1 + $0xc6c] sm:$0xf]
  %v1203 = vld [vmem:[%s1 + $0xc70] sm:$0xf]
  %v1204 = vld [vmem:[%s1 + $0xc74] sm:$0xf]
  %v1205 = vld [vmem:[%s1 + $0xc78] sm:$0xf]
  %v1206 = vld [vmem:[%s1 + $0xc7c] sm:$0xf]
  %v1207 = vld [vmem:[%s1 + $0xc80] sm:$0xf]
  %v1208 = vld [vmem:[%s1 + $0xc84] sm:$0xf]
  %v1209 = vld [vmem:[%s1 + $0xc88] sm:$0xf]
  %v1210 = vld [vmem:[%s1 + $0xc8c] sm:$0xf]
  %v1211 = vld [vmem:[%s1 + $0xc90] sm:$0xf]
  %v1212 = vld [vmem:[%s1 + $0xc94] sm:$0xf]
  %v1213 = vld [vmem:[%s1 + $0xc98] sm:$0xf]
  %v1214 = vld [vmem:[%s1 + $0xc9c] sm:$0xf]
  %v1215 = vld [vmem:[%s1 + $0xca0] sm:$0xf]
  %v1216 = vld [vmem:[%s1 + $0xca4] sm:$0xf]
  %v1217 = vld [vmem:[%s1 + $0xca8] sm:$0xf]
  %v1218 = vld [vmem:[%s1 + $0xcac] sm:$0xf]
  %v1219 = vld [vmem:[%s1 + $0xcb0] sm:$0xf]
  %v1220 = vld [vmem:[%s1 + $0xcb4] sm:$0xf]
  %v1221 = vld [vmem:[%s1 + $0xcb8] sm:$0xf]
  %v1222 = vld [vmem:[%s1 + $0xcbc] sm:$0xf]
  %v1223 = vld [vmem:[%s1 + $0xcc0] sm:$0xf]
  %v1224 = vld [vmem:[%s1 + $0xcc4] sm:$0xf]
  %v1225 = vld [vmem:[%s1 + $0xcc8] sm:$0xf]
  %v1226 = vld [vmem:[%s1 + $0xccc] sm:$0xf]
  %v1227 = vld [vmem:[%s1 + $0xcd0] sm:$0xf]
  %v1228 = vld [vmem:[%s1 + $0xcd4] sm:$0xf]
  %v1229 = vld [vmem:[%s1 + $0xcd8] sm:$0xf]
  %v1230 = vld [vmem:[%s1 + $0xcdc] sm:$0xf]
  %v1231 = vld [vmem:[%s1 + $0xce0] sm:$0xf]
  %v1232 = vld [vmem:[%s1 + $0xce4] sm:$0xf]
  %v1233 = vld [vmem:[%s1 + $0xce8] sm:$0xf]
  %v1234 = vld [vmem:[%s1 + $0xcec] sm:$0xf]
  %v1235 = vld [vmem:[%s1 + $0xcf0] sm:$0xf]
  %v1236 = vld [vmem:[%s1 + $0xcf4] sm:$0xf]
  %v1237 = vld [vmem:[%s1 + $0xcf8] sm:$0xf]
  %v1238 = vld [vmem:[%s1 + $0xcfc] sm:$0xf]
  %v1239 = vld [vmem:[%s1 + $0xd00] sm:$0xf]
  %v1240 = vld [vmem:[%s1 + $0xd04] sm:$0xf]
  %v1241 = vld [vmem:[%s1 + $0xd08] sm:$0xf]
  %v1242 = vld [vmem:[%s1 + $0xd0c] sm:$0xf]
  %v1243 = vld [vmem:[%s1 + $0xd10] sm:$0xf]
  %v1244 = vld [vmem:[%s1 + $0xd14] sm:$0xf]
  %v1245 = vld [vmem:[%s1 + $0xd18] sm:$0xf]
  %v1246 = vld [vmem:[%s1 + $0xd1c] sm:$0xf]
  %v1247 = vld [vmem:[%s1 + $0xd20] sm:$0xf]
  %v1248 = vld [vmem:[%s1 + $0xd24] sm:$0xf]
  %v1249 = vld [vmem:[%s1 + $0xd28] sm:$0xf]
  %v1250 = vld [vmem:[%s1 + $0xd2c] sm:$0xf]
  %v1251 = vld [vmem:[%s1 + $0xd30] sm:$0xf]
  %v1252 = vld [vmem:[%s1 + $0xd34] sm:$0xf]
  %v1253 = vld [vmem:[%s1 + $0xd38] sm:$0xf]
  %v1254 = vld [vmem:[%s1 + $0xd3c] sm:$0xf]
  %v1255 = vld [vmem:[%s1 + $0xd40] sm:$0xf]
  %v1256 = vld [vmem:[%s1 + $0xd44] sm:$0xf]
  %v1257 = vld [vmem:[%s1 + $0xd48] sm:$0xf]
  %v1258 = vld [vmem:[%s1 + $0xd4c] sm:$0xf]
  %v1259 = vld [vmem:[%s1 + $0xd50] sm:$0xf]
  %v1260 = vld [vmem:[%s1 + $0xd54] sm:$0xf]
  %v1261 = vld [vmem:[%s1 + $0xd58] sm:$0xf]
  %v1262 = vld [vmem:[%s1 + $0xd5c] sm:$0xf]
  %v1263 = vld [vmem:[%s1 + $0xd60] sm:$0xf]
  %v1264 = vld [vmem:[%s1 + $0xd64] sm:$0xf]
  %v1265 = vld [vmem:[%s1 + $0xd68] sm:$0xf]
  %v1266 = vld [vmem:[%s1 + $0xd6c] sm:$0xf]
  %v1267 = vld [vmem:[%s1 + $0xd70] sm:$0xf]
  %v1268 = vld [vmem:[%s1 + $0xd74] sm:$0xf]
  %v1269 = vld [vmem:[%s1 + $0xd78] sm:$0xf]
  %v1270 = vld [vmem:[%s1 + $0xd7c] sm:$0xf]
  %v1271 = vld [vmem:[%s1 + $0xd80] sm:$0xf]
  %v1272 = vld [vmem:[%s1 + $0xd84] sm:$0xf]
  %v1273 = vld [vmem:[%s1 + $0xd88] sm:$0xf]
  %v1274 = vld [vmem:[%s1 + $0xd8c] sm:$0xf]
  %v1275 = vld [vmem:[%s1 + $0xd90] sm:$0xf]
  %v1276 = vld [vmem:[%s1 + $0xd94] sm:$0xf]
  %v1277 = vld [vmem:[%s1 + $0xd98] sm:$0xf]
  %v1278 = vld [vmem:[%s1 + $0xd9c] sm:$0xf]
  %v1279 = vld [vmem:[%s1 + $0xda0] sm:$0xf]
  %v1280 = vld [vmem:[%s1 + $0xda4] sm:$0xf]
  %v1281 = vld [vmem:[%s1 + $0xda8] sm:$0xf]
  %v1282 = vld [vmem:[%s1 + $0xdac] sm:$0xf]
  %v1283 = vld [vmem:[%s1 + $0xdb0] sm:$0xf]
  %v1284 = vld [vmem:[%s1 + $0xdb4] sm:$0xf]
  %v1285 = vld [vmem:[%s1 + $0xdb8] sm:$0xf]
  %v1286 = vld [vmem:[%s1 + $0xdbc] sm:$0xf]
  %v1287 = vld [vmem:[%s1 + $0xdc0] sm:$0xf]
  %v1288 = vld [vmem:[%s1 + $0xdc4] sm:$0xf]
  %v1289 = vld [vmem:[%s1 + $0xdc8] sm:$0xf]
  %v1290 = vld [vmem:[%s1 + $0xdcc] sm:$0xf]
  %v1291 = vld [vmem:[%s1 + $0xdd0] sm:$0xf]
  %v1292 = vld [vmem:[%s1 + $0xdd4] sm:$0xf]
  %v1293 = vld [vmem:[%s1 + $0xdd8] sm:$0xf]
  %v1294 = vld [vmem:[%s1 + $0xddc] sm:$0xf]
  %v1295 = vld [vmem:[%s1 + $0xde0] sm:$0xf]
  %v1296 = vld [vmem:[%s1 + $0xde4] sm:$0xf]
  %v1297 = vld [vmem:[%s1 + $0xde8] sm:$0xf]
  %v1298 = vld [vmem:[%s1 + $0xdec] sm:$0xf]
  %v1299 = vld [vmem:[%s1 + $0xdf0] sm:$0xf]
  %v1300 = vld [vmem:[%s1 + $0xdf4] sm:$0xf]
  %v1301 = vld [vmem:[%s1 + $0xdf8] sm:$0xf]
  %v1302 = vld [vmem:[%s1 + $0xdfc] sm:$0xf]
  %v1303 = vld [vmem:[%s1 + $0xe00] sm:$0xf]
  %v1304 = vld [vmem:[%s1 + $0xe04] sm:$0xf]
  %v1305 = vld [vmem:[%s1 + $0xe08] sm:$0xf]
  %v1306 = vld [vmem:[%s1 + $0xe0c] sm:$0xf]
  %v1307 = vld [vmem:[%s1 + $0xe10] sm:$0xf]
  %v1308 = vld [vmem:[%s1 + $0xe14] sm:$0xf]
  %v1309 = vld [vmem:[%s1 + $0xe18] sm:$0xf]
  %v1310 = vld [vmem:[%s1 + $0xe1c] sm:$0xf]
  %v1311 = vld [vmem:[%s1 + $0xe20] sm:$0xf]
  %v1312 = vld [vmem:[%s1 + $0xe24] sm:$0xf]
  %v1313 = vld [vmem:[%s1 + $0xe28] sm:$0xf]
  %v1314 = vld [vmem:[%s1 + $0xe2c] sm:$0xf]
  %v1315 = vld [vmem:[%s1 + $0xe30] sm:$0xf]
  %v1316 = vld [vmem:[%s1 + $0xe34] sm:$0xf]
  %v1317 = vld [vmem:[%s1 + $0xe38] sm:$0xf]
  %v1318 = vld [vmem:[%s1 + $0xe3c] sm:$0xf]
  %v1319 = vld [vmem:[%s1 + $0xe40] sm:$0xf]
  %v1320 = vld [vmem:[%s1 + $0xe44] sm:$0xf]
  %v1321 = vld [vmem:[%s1 + $0xe48] sm:$0xf]
  %v1322 = vld [vmem:[%s1 + $0xe4c] sm:$0xf]
  %v1323 = vld [vmem:[%s1 + $0xe50] sm:$0xf]
  %v1324 = vld [vmem:[%s1 + $0xe54] sm:$0xf]
  %v1325 = vld [vmem:[%s1 + $0xe58] sm:$0xf]
  %v1326 = vld [vmem:[%s1 + $0xe5c] sm:$0xf]
  %v1327 = vld [vmem:[%s1 + $0xe60] sm:$0xf]
  %v1328 = vld [vmem:[%s1 + $0xe64] sm:$0xf]
  %v1329 = vld [vmem:[%s1 + $0xe68] sm:$0xf]
  %v1330 = vld [vmem:[%s1 + $0xe6c] sm:$0xf]
  %v1331 = vld [vmem:[%s1 + $0xe70] sm:$0xf]
  %v1332 = vld [vmem:[%s1 + $0xe74] sm:$0xf]
  %v1333 = vld [vmem:[%s1 + $0xe78] sm:$0xf]
  %v1334 = vld [vmem:[%s1 + $0xe7c] sm:$0xf]
  %v1335 = vld [vmem:[%s1 + $0xe80] sm:$0xf]
  %v1336 = vld [vmem:[%s1 + $0xe84] sm:$0xf]
  %v1337 = vld [vmem:[%s1 + $0xe88] sm:$0xf]
  %v1338 = vld [vmem:[%s1 + $0xe8c] sm:$0xf]
  %v1339 = vld [vmem:[%s1 + $0xe90] sm:$0xf]
  %v1340 = vld [vmem:[%s1 + $0xe94] sm:$0xf]
  %v1341 = vld [vmem:[%s1 + $0xe98] sm:$0xf]
  %v1342 = vld [vmem:[%s1 + $0xe9c] sm:$0xf]
  %v1343 = vld [vmem:[%s1 + $0xea0] sm:$0xf]
  %v1344 = vld [vmem:[%s1 + $0xea4] sm:$0xf]
  %v1345 = vld [vmem:[%s1 + $0xea8] sm:$0xf]
  %v1346 = vld [vmem:[%s1 + $0xeac] sm:$0xf]
  %v1347 = vld [vmem:[%s1 + $0xeb0] sm:$0xf]
  %v1348 = vld [vmem:[%s1 + $0xeb4] sm:$0xf]
  %v1349 = vld [vmem:[%s1 + $0xeb8] sm:$0xf]
  %v1350 = vld [vmem:[%s1 + $0xebc] sm:$0xf]
  %v1351 = vld [vmem:[%s1 + $0xec0] sm:$0xf]
  %v1352 = vld [vmem:[%s1 + $0xec4] sm:$0xf]
  %v1353 = vld [vmem:[%s1 + $0xec8] sm:$0xf]
  %v1354 = vld [vmem:[%s1 + $0xecc] sm:$0xf]
  %v1355 = vld [vmem:[%s1 + $0xed0] sm:$0xf]
  %v1356 = vld [vmem:[%s1 + $0xed4] sm:$0xf]
  %v1357 = vld [vmem:[%s1 + $0xed8] sm:$0xf]
  %v1358 = vld [vmem:[%s1 + $0xedc] sm:$0xf]
  %v1359 = vld [vmem:[%s1 + $0xee0] sm:$0xf]
  %v1360 = vld [vmem:[%s1 + $0xee4] sm:$0xf]
  %v1361 = vld [vmem:[%s1 + $0xee8] sm:$0xf]
  %v1362 = vld [vmem:[%s1 + $0xeec] sm:$0xf]
  %v1363 = vld [vmem:[%s1 + $0xef0] sm:$0xf]
  %v1364 = vld [vmem:[%s1 + $0xef4] sm:$0xf]
  %v1365 = vld [vmem:[%s1 + $0xef8] sm:$0xf]
  %v1366 = vld [vmem:[%s1 + $0xefc] sm:$0xf]
  %v1367 = vld [vmem:[%s1 + $0xf00] sm:$0xf]
  %v1368 = vld [vmem:[%s1 + $0xf04] sm:$0xf]
  %v1369 = vld [vmem:[%s1 + $0xf08] sm:$0xf]
  %v1370 = vld [vmem:[%s1 + $0xf0c] sm:$0xf]
  %v1371 = vld [vmem:[%s1 + $0xf10] sm:$0xf]
  %v1372 = vld [vmem:[%s1 + $0xf14] sm:$0xf]
  %v1373 = vld [vmem:[%s1 + $0xf18] sm:$0xf]
  %v1374 = vld [vmem:[%s1 + $0xf1c] sm:$0xf]
  %v1375 = vld [vmem:[%s1 + $0xf20] sm:$0xf]
  %v1376 = vld [vmem:[%s1 + $0xf24] sm:$0xf]
  %v1377 = vld [vmem:[%s1 + $0xf28] sm:$0xf]
  %v1378 = vld [vmem:[%s1 + $0xf2c] sm:$0xf]
  %v1379 = vld [vmem:[%s1 + $0xf30] sm:$0xf]
  %v1380 = vld [vmem:[%s1 + $0xf34] sm:$0xf]
  %v1381 = vld [vmem:[%s1 + $0xf38] sm:$0xf]
  %v1382 = vld [vmem:[%s1 + $0xf3c] sm:$0xf]
  %v1383 = vld [vmem:[%s1 + $0xf40] sm:$0xf]
  %v1384 = vld [vmem:[%s1 + $0xf44] sm:$0xf]
  %v1385 = vld [vmem:[%s1 + $0xf48] sm:$0xf]
  %v1386 = vld [vmem:[%s1 + $0xf4c] sm:$0xf]
  %v1387 = vld [vmem:[%s1 + $0xf50] sm:$0xf]
  %v1388 = vld [vmem:[%s1 + $0xf54] sm:$0xf]
  %v1389 = vld [vmem:[%s1 + $0xf58] sm:$0xf]
  %v1390 = vld [vmem:[%s1 + $0xf5c] sm:$0xf]
  %v1391 = vld [vmem:[%s1 + $0xf60] sm:$0xf]
  %v1392 = vld [vmem:[%s1 + $0xf64] sm:$0xf]
  %v1393 = vld [vmem:[%s1 + $0xf68] sm:$0xf]
  %v1394 = vld [vmem:[%s1 + $0xf6c] sm:$0xf]
  %v1395 = vld [vmem:[%s1 + $0xf70] sm:$0xf]
  %v1396 = vld [vmem:[%s1 + $0xf74] sm:$0xf]
  %v1397 = vld [vmem:[%s1 + $0xf78] sm:$0xf]
  %v1398 = vld [vmem:[%s1 + $0xf7c] sm:$0xf]
  %v1399 = vld [vmem:[%s1 + $0xf80] sm:$0xf]
  %v1400 = vld [vmem:[%s1 + $0xf84] sm:$0xf]
  %v1401 = vld [vmem:[%s1 + $0xf88] sm:$0xf]
  %v1402 = vld [vmem:[%s1 + $0xf8c] sm:$0xf]
  %v1403 = vld [vmem:[%s1 + $0xf90] sm:$0xf]
  %v1404 = vld [vmem:[%s1 + $0xf94] sm:$0xf]
  %v1405 = vld [vmem:[%s1 + $0xf98] sm:$0xf]
  %v1406 = vld [vmem:[%s1 + $0xf9c] sm:$0xf]
  %v1407 = vld [vmem:[%s1 + $0xfa0] sm:$0xf]
  %v1408 = vld [vmem:[%s1 + $0xfa4] sm:$0xf]
  %v1409 = vld [vmem:[%s1 + $0xfa8] sm:$0xf]
  %v1410 = vld [vmem:[%s1 + $0xfac] sm:$0xf]
  %v1411 = vld [vmem:[%s1 + $0xfb0] sm:$0xf]
  %v1412 = vld [vmem:[%s1 + $0xfb4] sm:$0xf]
  %v1413 = vld [vmem:[%s1 + $0xfb8] sm:$0xf]
  %v1414 = vld [vmem:[%s1 + $0xfbc] sm:$0xf]
  %v1415 = vld [vmem:[%s1 + $0xfc0] sm:$0xf]
  %v1416 = vld [vmem:[%s1 + $0xfc4] sm:$0xf]
  %v1417 = vld [vmem:[%s1 + $0xfc8] sm:$0xf]
  %v1418 = vld [vmem:[%s1 + $0xfcc] sm:$0xf]
  %v1419 = vld [vmem:[%s1 + $0xfd0] sm:$0xf]
  %v1420 = vld [vmem:[%s1 + $0xfd4] sm:$0xf]
  %v1421 = vld [vmem:[%s1 + $0xfd8] sm:$0xf]
  %v1422 = vld [vmem:[%s1 + $0xfdc] sm:$0xf]
  %v1423 = vld [vmem:[%s1 + $0xfe0] sm:$0xf]
  %v1424 = vld [vmem:[%s1 + $0xfe4] sm:$0xf]
  %v1425 = vld [vmem:[%s1 + $0xfe8] sm:$0xf]
  %v1426 = vld [vmem:[%s1 + $0xfec] sm:$0xf]
  %v1427 = vld [vmem:[%s1 + $0xff0] sm:$0xf]
  %v1428 = vld [vmem:[%s1 + $0xff4] sm:$0xf]
  %v1429 = vld [vmem:[%s1 + $0xff8] sm:$0xf]
  %v1430 = vld [vmem:[%s1 + $0xffc] sm:$0xf]
  %v1431 = vld [vmem:[%s1 + $0x1000] sm:$0xf]
  %v1432 = vld [vmem:[%s1 + $0x1004] sm:$0xf]
  %v1433 = vld [vmem:[%s1 + $0x1008] sm:$0xf]
  %v1434 = vld [vmem:[%s1 + $0x100c] sm:$0xf]
  %v1435 = vld [vmem:[%s1 + $0x1010] sm:$0xf]
  %v1436 = vld [vmem:[%s1 + $0x1014] sm:$0xf]
  %v1437 = vld [vmem:[%s1 + $0x1018] sm:$0xf]
  %v1438 = vld [vmem:[%s1 + $0x101c] sm:$0xf]
  %v1439 = vld [vmem:[%s1 + $0x1020] sm:$0xf]
  %v1440 = vld [vmem:[%s1 + $0x1024] sm:$0xf]
  %v1441 = vld [vmem:[%s1 + $0x1028] sm:$0xf]
  %v1442 = vld [vmem:[%s1 + $0x102c] sm:$0xf]
  %v1443 = vld [vmem:[%s1 + $0x1030] sm:$0xf]
  %v1444 = vld [vmem:[%s1 + $0x1034] sm:$0xf]
  %v1445 = vld [vmem:[%s1 + $0x1038] sm:$0xf]
  %v1446 = vld [vmem:[%s1 + $0x103c] sm:$0xf]
  %v1447 = vld [vmem:[%s1 + $0x1040] sm:$0xf]
  %v1448 = vld [vmem:[%s1 + $0x1044] sm:$0xf]
  %v1449 = vld [vmem:[%s1 + $0x1048] sm:$0xf]
  %v1450 = vld [vmem:[%s1 + $0x104c] sm:$0xf]
  %v1451 = vld [vmem:[%s1 + $0x1050] sm:$0xf]
  %v1452 = vld [vmem:[%s1 + $0x1054] sm:$0xf]
  %v1453 = vld [vmem:[%s1 + $0x1058] sm:$0xf]
  %v1454 = vld [vmem:[%s1 + $0x105c] sm:$0xf]
  %v1455 = vld [vmem:[%s1 + $0x1060] sm:$0xf]
  %v1456 = vld [vmem:[%s1 + $0x1064] sm:$0xf]
  %v1457 = vld [vmem:[%s1 + $0x1068] sm:$0xf]
  %v1458 = vld [vmem:[%s1 + $0x106c] sm:$0xf]
  %v1459 = vld [vmem:[%s1 + $0x1070] sm:$0xf]
  %v1460 = vld [vmem:[%s1 + $0x1074] sm:$0xf]
  %v1461 = vld [vmem:[%s1 + $0x1078] sm:$0xf]
  %v1462 = vld [vmem:[%s1 + $0x107c] sm:$0xf]
  %v1463 = vld [vmem:[%s1 + $0x1080] sm:$0xf]
  %v1464 = vld [vmem:[%s1 + $0x1084] sm:$0xf]
  %v1465 = vld [vmem:[%s1 + $0x1088] sm:$0xf]
  %v1466 = vld [vmem:[%s1 + $0x108c] sm:$0xf]
  %v1467 = vld [vmem:[%s1 + $0x1090] sm:$0xf]
  %v1468 = vld [vmem:[%s1 + $0x1094] sm:$0xf]
  %v1469 = vld [vmem:[%s1 + $0x1098] sm:$0xf]
  %v1470 = vld [vmem:[%s1 + $0x109c] sm:$0xf]
  %v1471 = vld [vmem:[%s1 + $0x10a0] sm:$0xf]
  %v1472 = vld [vmem:[%s1 + $0x10a4] sm:$0xf]
  %v1473 = vld [vmem:[%s1 + $0x10a8] sm:$0xf]
  %v1474 = vld [vmem:[%s1 + $0x10ac] sm:$0xf]
  %v1475 = vld [vmem:[%s1 + $0x10b0] sm:$0xf]
  %v1476 = vld [vmem:[%s1 + $0x10b4] sm:$0xf]
  %v1477 = vld [vmem:[%s1 + $0x10b8] sm:$0xf]
  %v1478 = vld [vmem:[%s1 + $0x10bc] sm:$0xf]
  %v1479 = vld [vmem:[%s1 + $0x10c0] sm:$0xf]
  %v1480 = vld [vmem:[%s1 + $0x10c4] sm:$0xf]
  %v1481 = vld [vmem:[%s1 + $0x10c8] sm:$0xf]
  %v1482 = vld [vmem:[%s1 + $0x10cc] sm:$0xf]
  %v1483 = vld [vmem:[%s1 + $0x10d0] sm:$0xf]
  %v1484 = vld [vmem:[%s1 + $0x10d4] sm:$0xf]
  %v1485 = vld [vmem:[%s1 + $0x10d8] sm:$0xf]
  %v1486 = vld [vmem:[%s1 + $0x10dc] sm:$0xf]
  %v1487 = vld [vmem:[%s1 + $0x10e0] sm:$0xf]
  %v1488 = vld [vmem:[%s1 + $0x10e4] sm:$0xf]
  %v1489 = vld [vmem:[%s1 + $0x10e8] sm:$0xf]
  %v1490 = vld [vmem:[%s1 + $0x10ec] sm:$0xf]
  %v1491 = vld [vmem:[%s1 + $0x10f0] sm:$0xf]
  %v1492 = vld [vmem:[%s1 + $0x10f4] sm:$0xf]
  %v1493 = vld [vmem:[%s1 + $0x10f8] sm:$0xf]
  %v1494 = vld [vmem:[%s1 + $0x10fc] sm:$0xf]
  %v1495 = vld [vmem:[%s1 + $0x1100] sm:$0xf]
  %v1496 = vld [vmem:[%s1 + $0x1104] sm:$0xf]
  %v1497 = vld [vmem:[%s1 + $0x1108] sm:$0xf]
  %v1498 = vld [vmem:[%s1 + $0x110c] sm:$0xf]
  %v1499 = vld [vmem:[%s1 + $0x1110] sm:$0xf]
  %v1500 = vld [vmem:[%s1 + $0x1114] sm:$0xf]
  %v1501 = vld [vmem:[%s1 + $0x1118] sm:$0xf]
  %v1502 = vld [vmem:[%s1 + $0x111c] sm:$0xf]
  %v1503 = vld [vmem:[%s1 + $0x1120] sm:$0xf]
  %v1504 = vld [vmem:[%s1 + $0x1124] sm:$0xf]
  %v1505 = vld [vmem:[%s1 + $0x1128] sm:$0xf]
  %v1506 = vld [vmem:[%s1 + $0x112c] sm:$0xf]
  %v1507 = vld [vmem:[%s1 + $0x1130] sm:$0xf]
  %v1508 = vld [vmem:[%s1 + $0x1134] sm:$0xf]
  %v1509 = vld [vmem:[%s1 + $0x1138] sm:$0xf]
  %v1510 = vld [vmem:[%s1 + $0x113c] sm:$0xf]
  %v1511 = vld [vmem:[%s1 + $0x1140] sm:$0xf]
  %v1512 = vld [vmem:[%s1 + $0x1144] sm:$0xf]
  %v1513 = vld [vmem:[%s1 + $0x1148] sm:$0xf]
  %v1514 = vld [vmem:[%s1 + $0x114c] sm:$0xf]
  %v1515 = vld [vmem:[%s1 + $0x1150] sm:$0xf]
  %v1516 = vld [vmem:[%s1 + $0x1154] sm:$0xf]
  %v1517 = vld [vmem:[%s1 + $0x1158] sm:$0xf]
  %v1518 = vld [vmem:[%s1 + $0x115c] sm:$0xf]
  %v1519 = vld [vmem:[%s1 + $0x1160] sm:$0xf]
  %v1520 = vld [vmem:[%s1 + $0x1164] sm:$0xf]
  %v1521 = vld [vmem:[%s1 + $0x1168] sm:$0xf]
  %v1522 = vld [vmem:[%s1 + $0x116c] sm:$0xf]
  %v1523 = vld [vmem:[%s1 + $0x1170] sm:$0xf]
  %v1524 = vld [vmem:[%s1 + $0x1174] sm:$0xf]
  %v1525 = vld [vmem:[%s1 + $0x1178] sm:$0xf]
  %v1526 = vld [vmem:[%s1 + $0x117c] sm:$0xf]
  %v1527 = vld [vmem:[%s1 + $0x1180] sm:$0xf]
  %v1528 = vld [vmem:[%s1 + $0x1184] sm:$0xf]
  %v1529 = vld [vmem:[%s1 + $0x1188] sm:$0xf]
  %v1530 = vld [vmem:[%s1 + $0x118c] sm:$0xf]
  %v1531 = vld [vmem:[%s1 + $0x1190] sm:$0xf]
  %v1532 = vld [vmem:[%s1 + $0x1194] sm:$0xf]
  %v1533 = vld [vmem:[%s1 + $0x1198] sm:$0xf]
  %v1534 = vld [vmem:[%s1 + $0x119c] sm:$0xf]
  %v1535 = vld [vmem:[%s1 + $0x11a0] sm:$0xf]
  %v1536 = vld [vmem:[%s1 + $0x11a4] sm:$0xf]
  %v1537 = vld [vmem:[%s1 + $0x11a8] sm:$0xf]
  %v1538 = vld [vmem:[%s1 + $0x11ac] sm:$0xf]
  %v1539 = vld [vmem:[%s1 + $0x11b0] sm:$0xf]
  %v1540 = vld [vmem:[%s1 + $0x11b4] sm:$0xf]
  %v1541 = vld [vmem:[%s1 + $0x11b8] sm:$0xf]
  %v1542 = vld [vmem:[%s1 + $0x11bc] sm:$0xf]
  %v1543 = vld [vmem:[%s1 + $0x11c0] sm:$0xf]
  %v1544 = vld [vmem:[%s1 + $0x11c4] sm:$0xf]
  %v1545 = vld [vmem:[%s1 + $0x11c8] sm:$0xf]
  %v1546 = vld [vmem:[%s1 + $0x11cc] sm:$0xf]
  %v1547 = vld [vmem:[%s1 + $0x11d0] sm:$0xf]
  %v1548 = vld [vmem:[%s1 + $0x11d4] sm:$0xf]
  %v1549 = vld [vmem:[%s1 + $0x11d8] sm:$0xf]
  %v1550 = vld [vmem:[%s1 + $0x11dc] sm:$0xf]
  %v1551 = vld [vmem:[%s1 + $0x11e0] sm:$0xf]
  %v1552 = vld [vmem:[%s1 + $0x11e4] sm:$0xf]
  %v1553 = vld [vmem:[%s1 + $0x11e8] sm:$0xf]
  %v1554 = vld [vmem:[%s1 + $0x11ec] sm:$0xf]
  %v1555 = vld [vmem:[%s1 + $0x11f0] sm:$0xf]
  %v1556 = vld [vmem:[%s1 + $0x11f4] sm:$0xf]
  %v1557 = vld [vmem:[%s1 + $0x11f8] sm:$0xf]
  %v1558 = vld [vmem:[%s1 + $0x11fc] sm:$0xf]
  %v1559 = vld [vmem:[%s1 + $0x1200] sm:$0xf]
  %v1560 = vld [vmem:[%s1 + $0x1204] sm:$0xf]
  %v1561 = vld [vmem:[%s1 + $0x1208] sm:$0xf]
  %v1562 = vld [vmem:[%s1 + $0x120c] sm:$0xf]
  %v1563 = vld [vmem:[%s1 + $0x1210] sm:$0xf]
  %v1564 = vld [vmem:[%s1 + $0x1214] sm:$0xf]
  %v1565 = vld [vmem:[%s1 + $0x1218] sm:$0xf]
  %v1566 = vld [vmem:[%s1 + $0x121c] sm:$0xf]
  %v1567 = vld [vmem:[%s1 + $0x1220] sm:$0xf]
  %v1568 = vld [vmem:[%s1 + $0x1224] sm:$0xf]
  %v1569 = vld [vmem:[%s1 + $0x1228] sm:$0xf]
  %v1570 = vld [vmem:[%s1 + $0x122c] sm:$0xf]
  %v1571 = vld [vmem:[%s1 + $0x1230] sm:$0xf]
  %v1572 = vld [vmem:[%s1 + $0x1234] sm:$0xf]
  %v1573 = vld [vmem:[%s1 + $0x1238] sm:$0xf]
  %v1574 = vld [vmem:[%s1 + $0x123c] sm:$0xf]
  %v1575 = vld [vmem:[%s1 + $0x1240] sm:$0xf]
  %v1576 = vld [vmem:[%s1 + $0x1244] sm:$0xf]
  %v1577 = vld [vmem:[%s1 + $0x1248] sm:$0xf]
  %v1578 = vld [vmem:[%s1 + $0x124c] sm:$0xf]
  %v1579 = vld [vmem:[%s1 + $0x1250] sm:$0xf]
  %v1580 = vld [vmem:[%s1 + $0x1254] sm:$0xf]
  %v1581 = vld [vmem:[%s1 + $0x1258] sm:$0xf]
  %v1582 = vld [vmem:[%s1 + $0x125c] sm:$0xf]
  %v1583 = vld [vmem:[%s1 + $0x1260] sm:$0xf]
  %v1584 = vld [vmem:[%s1 + $0x1264] sm:$0xf]
  %v1585 = vld [vmem:[%s1 + $0x1268] sm:$0xf]
  %v1586 = vld [vmem:[%s1 + $0x126c] sm:$0xf]
  %v1587 = vld [vmem:[%s1 + $0x1270] sm:$0xf]
  %v1588 = vld [vmem:[%s1 + $0x1274] sm:$0xf]
  %v1589 = vld [vmem:[%s1 + $0x1278] sm:$0xf]
  %v1590 = vld [vmem:[%s1 + $0x127c] sm:$0xf]
  %v1591 = vld [vmem:[%s1 + $0x1280] sm:$0xf]
  %v1592 = vld [vmem:[%s1 + $0x1284] sm:$0xf]
  %v1593 = vld [vmem:[%s1 + $0x1288] sm:$0xf]
  %v1594 = vld [vmem:[%s1 + $0x128c] sm:$0xf]
  %v1595 = vld [vmem:[%s1 + $0x1290] sm:$0xf]
  %v1596 = vld [vmem:[%s1 + $0x1294] sm:$0xf]
  %v1597 = vld [vmem:[%s1 + $0x1298] sm:$0xf]
  %v1598 = vld [vmem:[%s1 + $0x129c] sm:$0xf]
  %v1599 = vld [vmem:[%s1 + $0x12a0] sm:$0xf]
  %v1600 = vld [vmem:[%s1 + $0x12a4] sm:$0xf]
  %v1601 = vld [vmem:[%s1 + $0x12a8] sm:$0xf]
  %v1602 = vld [vmem:[%s1 + $0x12ac] sm:$0xf]
  %v1603 = vld [vmem:[%s1 + $0x12b0] sm:$0xf]
  %v1604 = vld [vmem:[%s1 + $0x12b4] sm:$0xf]
  %v1605 = vld [vmem:[%s1 + $0x12b8] sm:$0xf]
  %v1606 = vld [vmem:[%s1 + $0x12bc] sm:$0xf]
  %v1607 = vld [vmem:[%s1 + $0x12c0] sm:$0xf]
  %v1608 = vld [vmem:[%s1 + $0x12c4] sm:$0xf]
  %v1609 = vld [vmem:[%s1 + $0x12c8] sm:$0xf]
  %v1610 = vld [vmem:[%s1 + $0x12cc] sm:$0xf]
  %v1611 = vld [vmem:[%s1 + $0x12d0] sm:$0xf]
  %v1612 = vld [vmem:[%s1 + $0x12d4] sm:$0xf]
  %v1613 = vld [vmem:[%s1 + $0x12d8] sm:$0xf]
  %v1614 = vld [vmem:[%s1 + $0x12dc] sm:$0xf]
  %v1615 = vld [vmem:[%s1 + $0x12e0] sm:$0xf]
  %v1616 = vld [vmem:[%s1 + $0x12e4] sm:$0xf]
  %v1617 = vld [vmem:[%s1 + $0x12e8] sm:$0xf]
  %v1618 = vld [vmem:[%s1 + $0x12ec] sm:$0xf]
  %v1619 = vld [vmem:[%s1 + $0x12f0] sm:$0xf]
  %v1620 = vld [vmem:[%s1 + $0x12f4] sm:$0xf]
  %v1621 = vld [vmem:[%s1 + $0x12f8] sm:$0xf]
  %v1622 = vld [vmem:[%s1 + $0x12fc] sm:$0xf]
  %v1623 = vld [vmem:[%s1 + $0x1300] sm:$0xf]
  %v1624 = vld [vmem:[%s1 + $0x1304] sm:$0xf]
  %v1625 = vld [vmem:[%s1 + $0x1308] sm:$0xf]
  %v1626 = vld [vmem:[%s1 + $0x130c] sm:$0xf]
  %v1627 = vld [vmem:[%s1 + $0x1310] sm:$0xf]
  %v1628 = vld [vmem:[%s1 + $0x1314] sm:$0xf]
  %v1629 = vld [vmem:[%s1 + $0x1318] sm:$0xf]
  %v1630 = vld [vmem:[%s1 + $0x131c] sm:$0xf]
  %v1631 = vld [vmem:[%s1 + $0x1320] sm:$0xf]
  %v1632 = vld [vmem:[%s1 + $0x1324] sm:$0xf]
  %v1633 = vld [vmem:[%s1 + $0x1328] sm:$0xf]
  %v1634 = vld [vmem:[%s1 + $0x132c] sm:$0xf]
  %v1635 = vld [vmem:[%s1 + $0x1330] sm:$0xf]
  %v1636 = vld [vmem:[%s1 + $0x1334] sm:$0xf]
  %v1637 = vld [vmem:[%s1 + $0x1338] sm:$0xf]
  %v1638 = vld [vmem:[%s1 + $0x133c] sm:$0xf]
  %v1639 = vld [vmem:[%s1 + $0x1340] sm:$0xf]
  %v1640 = vld [vmem:[%s1 + $0x1344] sm:$0xf]
  %v1641 = vld [vmem:[%s1 + $0x1348] sm:$0xf]
  %v1642 = vld [vmem:[%s1 + $0x134c] sm:$0xf]
  %v1643 = vld [vmem:[%s1 + $0x1350] sm:$0xf]
  %v1644 = vld [vmem:[%s1 + $0x1354] sm:$0xf]
  %v1645 = vld [vmem:[%s1 + $0x1358] sm:$0xf]
  %v1646 = vld [vmem:[%s1 + $0x135c] sm:$0xf]
  %v1647 = vld [vmem:[%s1 + $0x1360] sm:$0xf]
  %v1648 = vld [vmem:[%s1 + $0x1364] sm:$0xf]
  %v1649 = vld [vmem:[%s1 + $0x1368] sm:$0xf]
  %v1650 = vld [vmem:[%s1 + $0x136c] sm:$0xf]
  %v1651 = vld [vmem:[%s1 + $0x1370] sm:$0xf]
  %v1652 = vld [vmem:[%s1 + $0x1374] sm:$0xf]
  %v1653 = vld [vmem:[%s1 + $0x1378] sm:$0xf]
  %v1654 = vld [vmem:[%s1 + $0x137c] sm:$0xf]
  %v1655 = vld [vmem:[%s1 + $0x1380] sm:$0xf]
  %v1656 = vld [vmem:[%s1 + $0x1384] sm:$0xf]
  %v1657 = vld [vmem:[%s1 + $0x1388] sm:$0xf]
  %v1658 = vld [vmem:[%s1 + $0x138c] sm:$0xf]
  %v1659 = vld [vmem:[%s1 + $0x1390] sm:$0xf]
  %v1660 = vld [vmem:[%s1 + $0x1394] sm:$0xf]
  %v1661 = vld [vmem:[%s1 + $0x1398] sm:$0xf]
  %v1662 = vld [vmem:[%s1 + $0x139c] sm:$0xf]
  %v1663 = vld [vmem:[%s1 + $0x13a0] sm:$0xf]
  %v1664 = vld [vmem:[%s1 + $0x13a4] sm:$0xf]
  %v1665 = vld [vmem:[%s1 + $0x13a8] sm:$0xf]
  %v1666 = vld [vmem:[%s1 + $0x13ac] sm:$0xf]
  %v1667 = vld [vmem:[%s1 + $0x13b0] sm:$0xf]
  %v1668 = vld [vmem:[%s1 + $0x13b4] sm:$0xf]
  %v1669 = vld [vmem:[%s1 + $0x13b8] sm:$0xf]
  %v1670 = vld [vmem:[%s1 + $0x13bc] sm:$0xf]
  %v1671 = vld [vmem:[%s1 + $0x13c0] sm:$0xf]
  %v1672 = vld [vmem:[%s1 + $0x13c4] sm:$0xf]
  %v1673 = vld [vmem:[%s1 + $0x13c8] sm:$0xf]
  %v1674 = vld [vmem:[%s1 + $0x13cc] sm:$0xf]
  %v1675 = vld [vmem:[%s1 + $0x13d0] sm:$0xf]
  %v1676 = vld [vmem:[%s1 + $0x13d4] sm:$0xf]
  %v1677 = vld [vmem:[%s1 + $0x13d8] sm:$0xf]
  %v1678 = vld [vmem:[%s1 + $0x13dc] sm:$0xf]
  %v1679 = vld [vmem:[%s1 + $0x13e0] sm:$0xf]
  %v1680 = vld [vmem:[%s1 + $0x13e4] sm:$0xf]
  %v1681 = vld [vmem:[%s1 + $0x13e8] sm:$0xf]
  %v1682 = vld [vmem:[%s1 + $0x13ec] sm:$0xf]
  %v1683 = vld [vmem:[%s1 + $0x13f0] sm:$0xf]
  %v1684 = vld [vmem:[%s1 + $0x13f4] sm:$0xf]
  %v1685 = vld [vmem:[%s1 + $0x13f8] sm:$0xf]
  %v1686 = vld [vmem:[%s1 + $0x13fc] sm:$0xf]
  %v1687 = vld [vmem:[%s1 + $0x1400] sm:$0xf]
  %v1688 = vld [vmem:[%s1 + $0x1404] sm:$0xf]
  %v1689 = vld [vmem:[%s1 + $0x1408] sm:$0xf]
  %v1690 = vld [vmem:[%s1 + $0x140c] sm:$0xf]
  %v1691 = vld [vmem:[%s1 + $0x1410] sm:$0xf]
  %v1692 = vld [vmem:[%s1 + $0x1414] sm:$0xf]
  %v1693 = vld [vmem:[%s1 + $0x1418] sm:$0xf]
  %v1694 = vld [vmem:[%s1 + $0x141c] sm:$0xf]
  %v1695 = vld [vmem:[%s1 + $0x1420] sm:$0xf]
  %v1696 = vld [vmem:[%s1 + $0x1424] sm:$0xf]
  %v1697 = vld [vmem:[%s1 + $0x1428] sm:$0xf]
  %v1698 = vld [vmem:[%s1 + $0x142c] sm:$0xf]
  %v1699 = vld [vmem:[%s1 + $0x1430] sm:$0xf]
  %v1700 = vld [vmem:[%s1 + $0x1434] sm:$0xf]
  %v1701 = vld [vmem:[%s1 + $0x1438] sm:$0xf]
  %v1702 = vld [vmem:[%s1 + $0x143c] sm:$0xf]
  %v1703 = vld [vmem:[%s1 + $0x1440] sm:$0xf]
  %v1704 = vld [vmem:[%s1 + $0x1444] sm:$0xf]
  %v1705 = vld [vmem:[%s1 + $0x1448] sm:$0xf]
  %v1706 = vld [vmem:[%s1 + $0x144c] sm:$0xf]
  %v1707 = vld [vmem:[%s1 + $0x1450] sm:$0xf]
  %v1708 = vld [vmem:[%s1 + $0x1454] sm:$0xf]
  %v1709 = vld [vmem:[%s1 + $0x1458] sm:$0xf]
  %v1710 = vld [vmem:[%s1 + $0x145c] sm:$0xf]
  %v1711 = vld [vmem:[%s1 + $0x1460] sm:$0xf]
  %v1712 = vld [vmem:[%s1 + $0x1464] sm:$0xf]
  %v1713 = vld [vmem:[%s1 + $0x1468] sm:$0xf]
  %v1714 = vld [vmem:[%s1 + $0x146c] sm:$0xf]
  %v1715 = vld [vmem:[%s1 + $0x1470] sm:$0xf]
  %v1716 = vld [vmem:[%s1 + $0x1474] sm:$0xf]
  %v1717 = vld [vmem:[%s1 + $0x1478] sm:$0xf]
  %v1718 = vld [vmem:[%s1 + $0x147c] sm:$0xf]
  %v1719 = vld [vmem:[%s1 + $0x1480] sm:$0xf]
  %v1720 = vld [vmem:[%s1 + $0x1484] sm:$0xf]
  %v1721 = vld [vmem:[%s1 + $0x1488] sm:$0xf]
  %v1722 = vld [vmem:[%s1 + $0x148c] sm:$0xf]
  %v1723 = vld [vmem:[%s1 + $0x1490] sm:$0xf]
  %v1724 = vld [vmem:[%s1 + $0x1494] sm:$0xf]
  %v1725 = vld [vmem:[%s1 + $0x1498] sm:$0xf]
  %v1726 = vld [vmem:[%s1 + $0x149c] sm:$0xf]
  %v1727 = vld [vmem:[%s1 + $0x14a0] sm:$0xf]
  %v1728 = vld [vmem:[%s1 + $0x14a4] sm:$0xf]
  %v1729 = vld [vmem:[%s1 + $0x14a8] sm:$0xf]
  %v1730 = vld [vmem:[%s1 + $0x14ac] sm:$0xf]
  %v1731 = vld [vmem:[%s1 + $0x14b0] sm:$0xf]
  %v1732 = vld [vmem:[%s1 + $0x14b4] sm:$0xf]
  %v1733 = vld [vmem:[%s1 + $0x14b8] sm:$0xf]
  %v1734 = vld [vmem:[%s1 + $0x14bc] sm:$0xf]
  %v1735 = vld [vmem:[%s1 + $0x14c0] sm:$0xf]
  %v1736 = vld [vmem:[%s1 + $0x14c4] sm:$0xf]
  %v1737 = vld [vmem:[%s1 + $0x14c8] sm:$0xf]
  %v1738 = vld [vmem:[%s1 + $0x14cc] sm:$0xf]
  %v1739 = vld [vmem:[%s1 + $0x14d0] sm:$0xf]
  %v1740 = vld [vmem:[%s1 + $0x14d4] sm:$0xf]
  %v1741 = vld [vmem:[%s1 + $0x14d8] sm:$0xf]
  %v1742 = vld [vmem:[%s1 + $0x14dc] sm:$0xf]
  %v1743 = vld [vmem:[%s1 + $0x14e0] sm:$0xf]
  %v1744 = vld [vmem:[%s1 + $0x14e4] sm:$0xf]
  %v1745 = vld [vmem:[%s1 + $0x14e8] sm:$0xf]
  %v1746 = vld [vmem:[%s1 + $0x14ec] sm:$0xf]
  %v1747 = vld [vmem:[%s1 + $0x14f0] sm:$0xf]
  %v1748 = vld [vmem:[%s1 + $0x14f4] sm:$0xf]
  %v1749 = vld [vmem:[%s1 + $0x14f8] sm:$0xf]
  %v1750 = vld [vmem:[%s1 + $0x14fc] sm:$0xf]
  %v1751 = vld [vmem:[%s1 + $0x1500] sm:$0xf]
  %v1752 = vld [vmem:[%s1 + $0x1504] sm:$0xf]
  %v1753 = vld [vmem:[%s1 + $0x1508] sm:$0xf]
  %v1754 = vld [vmem:[%s1 + $0x150c] sm:$0xf]
  %v1755 = vld [vmem:[%s1 + $0x1510] sm:$0xf]
  %v1756 = vld [vmem:[%s1 + $0x1514] sm:$0xf]
  %v1757 = vld [vmem:[%s1 + $0x1518] sm:$0xf]
  %v1758 = vld [vmem:[%s1 + $0x151c] sm:$0xf]
  %v1759 = vld [vmem:[%s1 + $0x1520] sm:$0xf]
  %v1760 = vld [vmem:[%s1 + $0x1524] sm:$0xf]
  %v1761 = vld [vmem:[%s1 + $0x1528] sm:$0xf]
  %v1762 = vld [vmem:[%s1 + $0x152c] sm:$0xf]
  %v1763 = vld [vmem:[%s1 + $0x1530] sm:$0xf]
  %v1764 = vld [vmem:[%s1 + $0x1534] sm:$0xf]
  %v1765 = vld [vmem:[%s1 + $0x1538] sm:$0xf]
  %v1766 = vld [vmem:[%s1 + $0x153c] sm:$0xf]
  %v1767 = vld [vmem:[%s1 + $0x1540] sm:$0xf]
  %v1768 = vld [vmem:[%s1 + $0x1544] sm:$0xf]
  %v1769 = vld [vmem:[%s1 + $0x1548] sm:$0xf]
  %v1770 = vld [vmem:[%s1 + $0x154c] sm:$0xf]
  %v1771 = vld [vmem:[%s1 + $0x1550] sm:$0xf]
  %v1772 = vld [vmem:[%s1 + $0x1554] sm:$0xf]
  %v1773 = vld [vmem:[%s1 + $0x1558] sm:$0xf]
  %v1774 = vld [vmem:[%s1 + $0x155c] sm:$0xf]
  %v1775 = vld [vmem:[%s1 + $0x1560] sm:$0xf]
  %v1776 = vld [vmem:[%s1 + $0x1564] sm:$0xf]
  %v1777 = vld [vmem:[%s1 + $0x1568] sm:$0xf]
  %v1778 = vld [vmem:[%s1 + $0x156c] sm:$0xf]
  %v1779 = vld [vmem:[%s1 + $0x1570] sm:$0xf]
  %v1780 = vld [vmem:[%s1 + $0x1574] sm:$0xf]
  %v1781 = vld [vmem:[%s1 + $0x1578] sm:$0xf]
  %v1782 = vld [vmem:[%s1 + $0x157c] sm:$0xf]
  %v1783 = vld [vmem:[%s1 + $0x1580] sm:$0xf]
  %v1784 = vld [vmem:[%s1 + $0x1584] sm:$0xf]
  %v1785 = vld [vmem:[%s1 + $0x1588] sm:$0xf]
  %v1786 = vld [vmem:[%s1 + $0x158c] sm:$0xf]
  %v1787 = vld [vmem:[%s1 + $0x1590] sm:$0xf]
  %v1788 = vld [vmem:[%s1 + $0x1594] sm:$0xf]
  %v1789 = vld [vmem:[%s1 + $0x1598] sm:$0xf]
  %v1790 = vld [vmem:[%s1 + $0x159c] sm:$0xf]
  %v1791 = vld [vmem:[%s1 + $0x15a0] sm:$0xf]
  %v1792 = vld [vmem:[%s1 + $0x15a4] sm:$0xf]
  %v1793 = vld [vmem:[%s1 + $0x15a8] sm:$0xf]
  %v1794 = vld [vmem:[%s1 + $0x15ac] sm:$0xf]
  %v1795 = vld [vmem:[%s1 + $0x15b0] sm:$0xf]
  %v1796 = vld [vmem:[%s1 + $0x15b4] sm:$0xf]
  %v1797 = vld [vmem:[%s1 + $0x15b8] sm:$0xf]
  %v1798 = vld [vmem:[%s1 + $0x15bc] sm:$0xf]
  %v1799 = vld [vmem:[%s1 + $0x15c0] sm:$0xf]
  %v1800 = vld [vmem:[%s1 + $0x15c4] sm:$0xf]
  %v1801 = vld [vmem:[%s1 + $0x15c8] sm:$0xf]
  %v1802 = vld [vmem:[%s1 + $0x15cc] sm:$0xf]
  %v1803 = vld [vmem:[%s1 + $0x15d0] sm:$0xf]
  %v1804 = vld [vmem:[%s1 + $0x15d4] sm:$0xf]
  %v1805 = vld [vmem:[%s1 + $0x15d8] sm:$0xf]
  %v1806 = vld [vmem:[%s1 + $0x15dc] sm:$0xf]
  %v1807 = vld [vmem:[%s1 + $0x15e0] sm:$0xf]
  %v1808 = vld [vmem:[%s1 + $0x15e4] sm:$0xf]
  %v1809 = vld [vmem:[%s1 + $0x15e8] sm:$0xf]
  %v1810 = vld [vmem:[%s1 + $0x15ec] sm:$0xf]
  %v1811 = vld [vmem:[%s1 + $0x15f0] sm:$0xf]
  %v1812 = vld [vmem:[%s1 + $0x15f4] sm:$0xf]
  %v1813 = vld [vmem:[%s1 + $0x15f8] sm:$0xf]
  %v1814 = vld [vmem:[%s1 + $0x15fc] sm:$0xf]
  %v1815 = vld [vmem:[%s1 + $0x1600] sm:$0xf]
  %v1816 = vld [vmem:[%s1 + $0x1604] sm:$0xf]
  %v1817 = vld [vmem:[%s1 + $0x1608] sm:$0xf]
  %v1818 = vld [vmem:[%s1 + $0x160c] sm:$0xf]
  %v1819 = vld [vmem:[%s1 + $0x1610] sm:$0xf]
  %v1820 = vld [vmem:[%s1 + $0x1614] sm:$0xf]
  %v1821 = vld [vmem:[%s1 + $0x1618] sm:$0xf]
  %v1822 = vld [vmem:[%s1 + $0x161c] sm:$0xf]
  %v1823 = vld [vmem:[%s1 + $0x1620] sm:$0xf]
  %v1824 = vld [vmem:[%s1 + $0x1624] sm:$0xf]
  %v1825 = vld [vmem:[%s1 + $0x1628] sm:$0xf]
  %v1826 = vld [vmem:[%s1 + $0x162c] sm:$0xf]
  %v1827 = vld [vmem:[%s1 + $0x1630] sm:$0xf]
  %v1828 = vld [vmem:[%s1 + $0x1634] sm:$0xf]
  %v1829 = vld [vmem:[%s1 + $0x1638] sm:$0xf]
  %v1830 = vld [vmem:[%s1 + $0x163c] sm:$0xf]
  %v1831 = vld [vmem:[%s1 + $0x1640] sm:$0xf]
  %v1832 = vld [vmem:[%s1 + $0x1644] sm:$0xf]
  %v1833 = vld [vmem:[%s1 + $0x1648] sm:$0xf]
  %v1834 = vld [vmem:[%s1 + $0x164c] sm:$0xf]
  %v1835 = vld [vmem:[%s1 + $0x1650] sm:$0xf]
  %v1836 = vld [vmem:[%s1 + $0x1654] sm:$0xf]
  %v1837 = vld [vmem:[%s1 + $0x1658] sm:$0xf]
  %v1838 = vld [vmem:[%s1 + $0x165c] sm:$0xf]
  %v1839 = vld [vmem:[%s1 + $0x1660] sm:$0xf]
  %v1840 = vld [vmem:[%s1 + $0x1664] sm:$0xf]
  %v1841 = vld [vmem:[%s1 + $0x1668] sm:$0xf]
  %v1842 = vld [vmem:[%s1 + $0x166c] sm:$0xf]
  %v1843 = vld [vmem:[%s1 + $0x1670] sm:$0xf]
  %v1844 = vld [vmem:[%s1 + $0x1674] sm:$0xf]
  %v1845 = vld [vmem:[%s1 + $0x1678] sm:$0xf]
  %v1846 = vld [vmem:[%s1 + $0x167c] sm:$0xf]
  %v1847 = vld [vmem:[%s1 + $0x1680] sm:$0xf]
  %v1848 = vld [vmem:[%s1 + $0x1684] sm:$0xf]
  %v1849 = vld [vmem:[%s1 + $0x1688] sm:$0xf]
  %v1850 = vld [vmem:[%s1 + $0x168c] sm:$0xf]
  %v1851 = vld [vmem:[%s1 + $0x1690] sm:$0xf]
  %v1852 = vld [vmem:[%s1 + $0x1694] sm:$0xf]
  %v1853 = vld [vmem:[%s1 + $0x1698] sm:$0xf]
  %v1854 = vld [vmem:[%s1 + $0x169c] sm:$0xf]
  %v1855 = vld [vmem:[%s1 + $0x16a0] sm:$0xf]
  %v1856 = vld [vmem:[%s1 + $0x16a4] sm:$0xf]
  %v1857 = vld [vmem:[%s1 + $0x16a8] sm:$0xf]
  %v1858 = vld [vmem:[%s1 + $0x16ac] sm:$0xf]
  %v1859 = vld [vmem:[%s1 + $0x16b0] sm:$0xf]
  %v1860 = vld [vmem:[%s1 + $0x16b4] sm:$0xf]
  %v1861 = vld [vmem:[%s1 + $0x16b8] sm:$0xf]
  %v1862 = vld [vmem:[%s1 + $0x16bc] sm:$0xf]
  %v1863 = vld [vmem:[%s1 + $0x16c0] sm:$0xf]
  %v1864 = vld [vmem:[%s1 + $0x16c4] sm:$0xf]
  %v1865 = vld [vmem:[%s1 + $0x16c8] sm:$0xf]
  %v1866 = vld [vmem:[%s1 + $0x16cc] sm:$0xf]
  %v1867 = vld [vmem:[%s1 + $0x16d0] sm:$0xf]
  %v1868 = vld [vmem:[%s1 + $0x16d4] sm:$0xf]
  %v1869 = vld [vmem:[%s1 + $0x16d8] sm:$0xf]
  %v1870 = vld [vmem:[%s1 + $0x16dc] sm:$0xf]
  %v1871 = vld [vmem:[%s1 + $0x16e0] sm:$0xf]
  %v1872 = vld [vmem:[%s1 + $0x16e4] sm:$0xf]
  %v1873 = vld [vmem:[%s1 + $0x16e8] sm:$0xf]
  %v1874 = vld [vmem:[%s1 + $0x16ec] sm:$0xf]
  %v1875 = vld [vmem:[%s1 + $0x16f0] sm:$0xf]
  %v1876 = vld [vmem:[%s1 + $0x16f4] sm:$0xf]
  %v1877 = vld [vmem:[%s1 + $0x16f8] sm:$0xf]
  %v1878 = vld [vmem:[%s1 + $0x16fc] sm:$0xf]
  %v1879 = vld [vmem:[%s1 + $0x1700] sm:$0xf]
  %v1880 = vld [vmem:[%s1 + $0x1704] sm:$0xf]
  %v1881 = vld [vmem:[%s1 + $0x1708] sm:$0xf]
  %v1882 = vld [vmem:[%s1 + $0x170c] sm:$0xf]
  %v1883 = vld [vmem:[%s1 + $0x1710] sm:$0xf]
  %v1884 = vld [vmem:[%s1 + $0x1714] sm:$0xf]
  %v1885 = vld [vmem:[%s1 + $0x1718] sm:$0xf]
  %v1886 = vld [vmem:[%s1 + $0x171c] sm:$0xf]
  %v1887 = vld [vmem:[%s1 + $0x1720] sm:$0xf]
  %v1888 = vld [vmem:[%s1 + $0x1724] sm:$0xf]
  %v1889 = vld [vmem:[%s1 + $0x1728] sm:$0xf]
  %v1890 = vld [vmem:[%s1 + $0x172c] sm:$0xf]
  %v1891 = vld [vmem:[%s1 + $0x1730] sm:$0xf]
  %v1892 = vld [vmem:[%s1 + $0x1734] sm:$0xf]
  %v1893 = vld [vmem:[%s1 + $0x1738] sm:$0xf]
  %v1894 = vld [vmem:[%s1 + $0x173c] sm:$0xf]
  %v1895 = vld [vmem:[%s1 + $0x1740] sm:$0xf]
  %v1896 = vld [vmem:[%s1 + $0x1744] sm:$0xf]
  %v1897 = vld [vmem:[%s1 + $0x1748] sm:$0xf]
  %v1898 = vld [vmem:[%s1 + $0x174c] sm:$0xf]
  %v1899 = vld [vmem:[%s1 + $0x1750] sm:$0xf]
  %v1900 = vld [vmem:[%s1 + $0x1754] sm:$0xf]
  %v1901 = vld [vmem:[%s1 + $0x1758] sm:$0xf]
  %v1902 = vld [vmem:[%s1 + $0x175c] sm:$0xf]
  %v1903 = vld [vmem:[%s1 + $0x1760] sm:$0xf]
  %v1904 = vld [vmem:[%s1 + $0x1764] sm:$0xf]
  %v1905 = vld [vmem:[%s1 + $0x1768] sm:$0xf]
  %v1906 = vld [vmem:[%s1 + $0x176c] sm:$0xf]
  %v1907 = vld [vmem:[%s1 + $0x1770] sm:$0xf]
  %v1908 = vld [vmem:[%s1 + $0x1774] sm:$0xf]
  %v1909 = vld [vmem:[%s1 + $0x1778] sm:$0xf]
  %v1910 = vld [vmem:[%s1 + $0x177c] sm:$0xf]
  %v1911 = vld [vmem:[%s1 + $0x1780] sm:$0xf]
  %v1912 = vld [vmem:[%s1 + $0x1784] sm:$0xf]
  %v1913 = vld [vmem:[%s1 + $0x1788] sm:$0xf]
  %v1914 = vld [vmem:[%s1 + $0x178c] sm:$0xf]
  %v1915 = vld [vmem:[%s1 + $0x1790] sm:$0xf]
  %v1916 = vld [vmem:[%s1 + $0x1794] sm:$0xf]
  %v1917 = vld [vmem:[%s1 + $0x1798] sm:$0xf]
  %v1918 = vld [vmem:[%s1 + $0x179c] sm:$0xf]
  %v1919 = vld [vmem:[%s1 + $0x17a0] sm:$0xf]
  %v1920 = vld [vmem:[%s1 + $0x17a4] sm:$0xf]
  %v1921 = vld [vmem:[%s1 + $0x17a8] sm:$0xf]
  %v1922 = vld [vmem:[%s1 + $0x17ac] sm:$0xf]
  %v1923 = vld [vmem:[%s1 + $0x17b0] sm:$0xf]
  %v1924 = vld [vmem:[%s1 + $0x17b4] sm:$0xf]
  %v1925 = vld [vmem:[%s1 + $0x17b8] sm:$0xf]
  %v1926 = vld [vmem:[%s1 + $0x17bc] sm:$0xf]
  %v1927 = vld [vmem:[%s1 + $0x17c0] sm:$0xf]
  %v1928 = vld [vmem:[%s1 + $0x17c4] sm:$0xf]
  %v1929 = vld [vmem:[%s1 + $0x17c8] sm:$0xf]
  %v1930 = vld [vmem:[%s1 + $0x17cc] sm:$0xf]
  %v1931 = vld [vmem:[%s1 + $0x17d0] sm:$0xf]
  %v1932 = vld [vmem:[%s1 + $0x17d4] sm:$0xf]
  %v1933 = vld [vmem:[%s1 + $0x17d8] sm:$0xf]
  %v1934 = vld [vmem:[%s1 + $0x17dc] sm:$0xf]
  %v1935 = vld [vmem:[%s1 + $0x17e0] sm:$0xf]
  %v1936 = vld [vmem:[%s1 + $0x17e4] sm:$0xf]
  %v1937 = vld [vmem:[%s1 + $0x17e8] sm:$0xf]
  %v1938 = vld [vmem:[%s1 + $0x17ec] sm:$0xf]
  %v1939 = vld [vmem:[%s1 + $0x17f0] sm:$0xf]
  %v1940 = vld [vmem:[%s1 + $0x17f4] sm:$0xf]
  %v1941 = vld [vmem:[%s1 + $0x17f8] sm:$0xf]
  %v1942 = vld [vmem:[%s1 + $0x17fc] sm:$0xf]
  %v1943 = vld [vmem:[%s1 + $0x1800] sm:$0xf]
  %v1944 = vld [vmem:[%s1 + $0x1804] sm:$0xf]
  %v1945 = vld [vmem:[%s1 + $0x1808] sm:$0xf]
  %v1946 = vld [vmem:[%s1 + $0x180c] sm:$0xf]
  %v1947 = vld [vmem:[%s1 + $0x1810] sm:$0xf]
  %v1948 = vld [vmem:[%s1 + $0x1814] sm:$0xf]
  %v1949 = vld [vmem:[%s1 + $0x1818] sm:$0xf]
  %v1950 = vld [vmem:[%s1 + $0x181c] sm:$0xf]
  %v1951 = vld [vmem:[%s1 + $0x1820] sm:$0xf]
  %v1952 = vld [vmem:[%s1 + $0x1824] sm:$0xf]
  %v1953 = vld [vmem:[%s1 + $0x1828] sm:$0xf]
  %v1954 = vld [vmem:[%s1 + $0x182c] sm:$0xf]
  %v1955 = vld [vmem:[%s1 + $0x1830] sm:$0xf]
  %v1956 = vld [vmem:[%s1 + $0x1834] sm:$0xf]
  %v1957 = vld [vmem:[%s1 + $0x1838] sm:$0xf]
  %v1958 = vld [vmem:[%s1 + $0x183c] sm:$0xf]
  %v1959 = vld [vmem:[%s1 + $0x1840] sm:$0xf]
  %v1960 = vld [vmem:[%s1 + $0x1844] sm:$0xf]
  %v1961 = vld [vmem:[%s1 + $0x1848] sm:$0xf]
  %v1962 = vld [vmem:[%s1 + $0x184c] sm:$0xf]
  %v1963 = vld [vmem:[%s1 + $0x1850] sm:$0xf]
  %v1964 = vld [vmem:[%s1 + $0x1854] sm:$0xf]
  %v1965 = vld [vmem:[%s1 + $0x1858] sm:$0xf]
  %v1966 = vld [vmem:[%s1 + $0x185c] sm:$0xf]
  %v1967 = vld [vmem:[%s1 + $0x1860] sm:$0xf]
  %v1968 = vld [vmem:[%s1 + $0x1864] sm:$0xf]
  %v1969 = vld [vmem:[%s1 + $0x1868] sm:$0xf]
  %v1970 = vld [vmem:[%s1 + $0x186c] sm:$0xf]
  %v1971 = vld [vmem:[%s1 + $0x1870] sm:$0xf]
  %v1972 = vld [vmem:[%s1 + $0x1874] sm:$0xf]
  %v1973 = vld [vmem:[%s1 + $0x1878] sm:$0xf]
  %v1974 = vld [vmem:[%s1 + $0x187c] sm:$0xf]
  %v1975 = vld [vmem:[%s1 + $0x1880] sm:$0xf]
  %v1976 = vld [vmem:[%s1 + $0x1884] sm:$0xf]
  %v1977 = vld [vmem:[%s1 + $0x1888] sm:$0xf]
  %v1978 = vld [vmem:[%s1 + $0x188c] sm:$0xf]
  %v1979 = vld [vmem:[%s1 + $0x1890] sm:$0xf]
  %v1980 = vld [vmem:[%s1 + $0x1894] sm:$0xf]
  %v1981 = vld [vmem:[%s1 + $0x1898] sm:$0xf]
  %v1982 = vld [vmem:[%s1 + $0x189c] sm:$0xf]
  %v1983 = vld [vmem:[%s1 + $0x18a0] sm:$0xf]
  %v1984 = vld [vmem:[%s1 + $0x18a4] sm:$0xf]
  %v1985 = vld [vmem:[%s1 + $0x18a8] sm:$0xf]
  %v1986 = vld [vmem:[%s1 + $0x18ac] sm:$0xf]
  %v1987 = vld [vmem:[%s1 + $0x18b0] sm:$0xf]
  %v1988 = vld [vmem:[%s1 + $0x18b4] sm:$0xf]
  %v1989 = vld [vmem:[%s1 + $0x18b8] sm:$0xf]
  %v1990 = vld [vmem:[%s1 + $0x18bc] sm:$0xf]
  %v1991 = vld [vmem:[%s1 + $0x18c0] sm:$0xf]
  %v1992 = vld [vmem:[%s1 + $0x18c4] sm:$0xf]
  %v1993 = vld [vmem:[%s1 + $0x18c8] sm:$0xf]
  %v1994 = vld [vmem:[%s1 + $0x18cc] sm:$0xf]
  %v1995 = vld [vmem:[%s1 + $0x18d0] sm:$0xf]
  %v1996 = vld [vmem:[%s1 + $0x18d4] sm:$0xf]
  %v1997 = vld [vmem:[%s1 + $0x18d8] sm:$0xf]
  %v1998 = vld [vmem:[%s1 + $0x18dc] sm:$0xf]
  %v1999 = vld [vmem:[%s1 + $0x18e0] sm:$0xf]
  %v2000 = vld [vmem:[%s1 + $0x18e4] sm:$0xf]
  %v2001 = vld [vmem:[%s1 + $0x18e8] sm:$0xf]
  %v2002 = vld [vmem:[%s1 + $0x18ec] sm:$0xf]
  %v2003 = vld [vmem:[%s1 + $0x18f0] sm:$0xf]
  %v2004 = vld [vmem:[%s1 + $0x18f4] sm:$0xf]
  %v2005 = vld [vmem:[%s1 + $0x18f8] sm:$0xf]
  %v2006 = vld [vmem:[%s1 + $0x18fc] sm:$0xf]
  %v2007 = vld [vmem:[%s1 + $0x1900] sm:$0xf]
  %v2008 = vld [vmem:[%s1 + $0x1904] sm:$0xf]
  %v2009 = vld [vmem:[%s1 + $0x1908] sm:$0xf]
  %v2010 = vld [vmem:[%s1 + $0x190c] sm:$0xf]
  %v2011 = vld [vmem:[%s1 + $0x1910] sm:$0xf]
  %v2012 = vld [vmem:[%s1 + $0x1914] sm:$0xf]
  %v2013 = vld [vmem:[%s1 + $0x1918] sm:$0xf]
  %v2014 = vld [vmem:[%s1 + $0x191c] sm:$0xf]
  %v2015 = vld [vmem:[%s1 + $0x1920] sm:$0xf]
  %v2016 = vld [vmem:[%s1 + $0x1924] sm:$0xf]
  %v2017 = vld [vmem:[%s1 + $0x1928] sm:$0xf]
  %v2018 = vld [vmem:[%s1 + $0x192c] sm:$0xf]
  %v2019 = vld [vmem:[%s1 + $0x1930] sm:$0xf]
  %v2020 = vld [vmem:[%s1 + $0x1934] sm:$0xf]
  %v2021 = vld [vmem:[%s1 + $0x1938] sm:$0xf]
  %v2022 = vld [vmem:[%s1 + $0x193c] sm:$0xf]
  %v2023 = vld [vmem:[%s1 + $0x1940] sm:$0xf]
  %v2024 = vld [vmem:[%s1 + $0x1944] sm:$0xf]
  %v2025 = vld [vmem:[%s1 + $0x1948] sm:$0xf]
  %v2026 = vld [vmem:[%s1 + $0x194c] sm:$0xf]
  %v2027 = vld [vmem:[%s1 + $0x1950] sm:$0xf]
  %v2028 = vld [vmem:[%s1 + $0x1954] sm:$0xf]
  %v2029 = vld [vmem:[%s1 + $0x1958] sm:$0xf]
  %v2030 = vld [vmem:[%s1 + $0x195c] sm:$0xf]
  %v2031 = vld [vmem:[%s1 + $0x1960] sm:$0xf]
  %v2032 = vld [vmem:[%s1 + $0x1964] sm:$0xf]
  %v2033 = vld [vmem:[%s1 + $0x1968] sm:$0xf]
  %v2034 = vld [vmem:[%s1 + $0x196c] sm:$0xf]
  %v2035 = vld [vmem:[%s1 + $0x1970] sm:$0xf]
  %v2036 = vld [vmem:[%s1 + $0x1974] sm:$0xf]
  %v2037 = vld [vmem:[%s1 + $0x1978] sm:$0xf]
  %v2038 = vld [vmem:[%s1 + $0x197c] sm:$0xf]
  %v2039 = vld [vmem:[%s1 + $0x1980] sm:$0xf]
  %v2040 = vld [vmem:[%s1 + $0x1984] sm:$0xf]
  %v2041 = vld [vmem:[%s1 + $0x1988] sm:$0xf]
  %v2042 = vld [vmem:[%s1 + $0x198c] sm:$0xf]
  %v2043 = vld [vmem:[%s1 + $0x1990] sm:$0xf]
  %v2044 = vld [vmem:[%s1 + $0x1994] sm:$0xf]
  %v2045 = vld [vmem:[%s1 + $0x1998] sm:$0xf]
  %v2046 = vld [vmem:[%s1 + $0x199c] sm:$0xf]
  %v2047 = vld [vmem:[%s1 + $0x19a0] sm:$0xf]
  %v2048 = vld [vmem:[%s1 + $0x19a4] sm:$0xf]
  %v2049 = vld [vmem:[%s1 + $0x19a8] sm:$0xf]
  %v2050 = vld [vmem:[%s1 + $0x19ac] sm:$0xf]
  %v2051 = vld [vmem:[%s1 + $0x19b0] sm:$0xf]
  %v2052 = vld [vmem:[%s1 + $0x19b4] sm:$0xf]
  %v2053 = vld [vmem:[%s1 + $0x19b8] sm:$0xf]
  %v2054 = vld [vmem:[%s1 + $0x19bc] sm:$0xf]
  %v2055 = vld [vmem:[%s1 + $0x19c0] sm:$0xf]
  %v2056 = vld [vmem:[%s1 + $0x19c4] sm:$0xf]
  %v2057 = vld [vmem:[%s1 + $0x19c8] sm:$0xf]
  %v2058 = vld [vmem:[%s1 + $0x19cc] sm:$0xf]
  %v2059 = vld [vmem:[%s1 + $0x19d0] sm:$0xf]
  %v2060 = vld [vmem:[%s1 + $0x19d4] sm:$0xf]
  %v2061 = vld [vmem:[%s1 + $0x19d8] sm:$0xf]
  %v2062 = vld [vmem:[%s1 + $0x19dc] sm:$0xf]
  %v2063 = vld [vmem:[%s1 + $0x19e0] sm:$0xf]
  %v2064 = vld [vmem:[%s1 + $0x19e4] sm:$0xf]
  %v2065 = vld [vmem:[%s1 + $0x19e8] sm:$0xf]
  %v2066 = vld [vmem:[%s1 + $0x19ec] sm:$0xf]
  %v2067 = vld [vmem:[%s1 + $0x19f0] sm:$0xf]
  %v2068 = vld [vmem:[%s1 + $0x19f4] sm:$0xf]
  %v2069 = vld [vmem:[%s1 + $0x19f8] sm:$0xf]
  %v2070 = vld [vmem:[%s1 + $0x19fc] sm:$0xf]
  %v2071 = vld [vmem:[%s1 + $0x1a00] sm:$0xf]
  %v2072 = vld [vmem:[%s1 + $0x1a04] sm:$0xf]
  %v2073 = vld [vmem:[%s1 + $0x1a08] sm:$0xf]
  %v2074 = vld [vmem:[%s1 + $0x1a0c] sm:$0xf]
  %v2075 = vld [vmem:[%s1 + $0x1a10] sm:$0xf]
  %v2076 = vld [vmem:[%s1 + $0x1a14] sm:$0xf]
  %v2077 = vld [vmem:[%s1 + $0x1a18] sm:$0xf]
  %v2078 = vld [vmem:[%s1 + $0x1a1c] sm:$0xf]
  %v2079 = vld [vmem:[%s1 + $0x1a20] sm:$0xf]
  %v2080 = vld [vmem:[%s1 + $0x1a24] sm:$0xf]
  %v2081 = vld [vmem:[%s1 + $0x1a28] sm:$0xf]
  %v2082 = vld [vmem:[%s1 + $0x1a2c] sm:$0xf]
  %v2083 = vld [vmem:[%s1 + $0x1a30] sm:$0xf]
  %v2084 = vld [vmem:[%s1 + $0x1a34] sm:$0xf]
  %v2085 = vld [vmem:[%s1 + $0x1a38] sm:$0xf]
  %v2086 = vld [vmem:[%s1 + $0x1a3c] sm:$0xf]
  %v2087 = vld [vmem:[%s1 + $0x1a40] sm:$0xf]
  %v2088 = vld [vmem:[%s1 + $0x1a44] sm:$0xf]
  %v2089 = vld [vmem:[%s1 + $0x1a48] sm:$0xf]
  %v2090 = vld [vmem:[%s1 + $0x1a4c] sm:$0xf]
  %v2091 = vld [vmem:[%s1 + $0x1a50] sm:$0xf]
  %v2092 = vld [vmem:[%s1 + $0x1a54] sm:$0xf]
  %v2093 = vld [vmem:[%s1 + $0x1a58] sm:$0xf]
  %v2094 = vld [vmem:[%s1 + $0x1a5c] sm:$0xf]
  %v2095 = vld [vmem:[%s1 + $0x1a60] sm:$0xf]
  %v2096 = vld [vmem:[%s1 + $0x1a64] sm:$0xf]
  %v2097 = vld [vmem:[%s1 + $0x1a68] sm:$0xf]
  %v2098 = vld [vmem:[%s1 + $0x1a6c] sm:$0xf]
  %v2099 = vld [vmem:[%s1 + $0x1a70] sm:$0xf]
  %v2100 = vld [vmem:[%s1 + $0x1a74] sm:$0xf]
  %v2101 = vld [vmem:[%s1 + $0x1a78] sm:$0xf]
  %v2102 = vld [vmem:[%s1 + $0x1a7c] sm:$0xf]
  %v2103 = vld [vmem:[%s1 + $0x1a80] sm:$0xf]
  %v2104 = vld [vmem:[%s1 + $0x1a84] sm:$0xf]
  %v2105 = vld [vmem:[%s1 + $0x1a88] sm:$0xf]
  %v2106 = vld [vmem:[%s1 + $0x1a8c] sm:$0xf]
  %v2107 = vld [vmem:[%s1 + $0x1a90] sm:$0xf]
  %v2108 = vld [vmem:[%s1 + $0x1a94] sm:$0xf]
  %v2109 = vld [vmem:[%s1 + $0x1a98] sm:$0xf]
  %v2110 = vld [vmem:[%s1 + $0x1a9c] sm:$0xf]
  %v2111 = vld [vmem:[%s1 + $0x1aa0] sm:$0xf]
  %v2112 = vld [vmem:[%s1 + $0x1aa4] sm:$0xf]
  %v2113 = vld [vmem:[%s1 + $0x1aa8] sm:$0xf]
  %v2114 = vld [vmem:[%s1 + $0x1aac] sm:$0xf]
  %v2115 = vld [vmem:[%s1 + $0x1ab0] sm:$0xf]
  %v2116 = vld [vmem:[%s1 + $0x1ab4] sm:$0xf]
  %v2117 = vld [vmem:[%s1 + $0x1ab8] sm:$0xf]
  %v2118 = vld [vmem:[%s1 + $0x1abc] sm:$0xf]
  %v2119 = vld [vmem:[%s1 + $0x1ac0] sm:$0xf]
  %v2120 = vld [vmem:[%s1 + $0x1ac4] sm:$0xf]
  %v2121 = vld [vmem:[%s1 + $0x1ac8] sm:$0xf]
  %v2122 = vld [vmem:[%s1 + $0x1acc] sm:$0xf]
  %v2123 = vld [vmem:[%s1 + $0x1ad0] sm:$0xf]
  %v2124 = vld [vmem:[%s1 + $0x1ad4] sm:$0xf]
  %v2125 = vld [vmem:[%s1 + $0x1ad8] sm:$0xf]
  %v2126 = vld [vmem:[%s1 + $0x1adc] sm:$0xf]
  %v2127 = vld [vmem:[%s1 + $0x1ae0] sm:$0xf]
  %v2128 = vld [vmem:[%s1 + $0x1ae4] sm:$0xf]
  %v2129 = vld [vmem:[%s1 + $0x1ae8] sm:$0xf]
  %v2130 = vld [vmem:[%s1 + $0x1aec] sm:$0xf]
  %v2131 = vld [vmem:[%s1 + $0x1af0] sm:$0xf]
  %v2132 = vld [vmem:[%s1 + $0x1af4] sm:$0xf]
  %v2133 = vld [vmem:[%s1 + $0x1af8] sm:$0xf]
  %v2134 = vld [vmem:[%s1 + $0x1afc] sm:$0xf]
  %v2135 = vld [vmem:[%s1 + $0x1b00] sm:$0xf]
  %v2136 = vld [vmem:[%s1 + $0x1b04] sm:$0xf]
  %v2137 = vld [vmem:[%s1 + $0x1b08] sm:$0xf]
  %v2138 = vld [vmem:[%s1 + $0x1b0c] sm:$0xf]
  %v2139 = vld [vmem:[%s1 + $0x1b10] sm:$0xf]
  %v2140 = vld [vmem:[%s1 + $0x1b14] sm:$0xf]
  %v2141 = vld [vmem:[%s1 + $0x1b18] sm:$0xf]
  %v2142 = vld [vmem:[%s1 + $0x1b1c] sm:$0xf]
  %v2143 = vld [vmem:[%s1 + $0x1b20] sm:$0xf]
  %v2144 = vld [vmem:[%s1 + $0x1b24] sm:$0xf]
  %v2145 = vld [vmem:[%s1 + $0x1b28] sm:$0xf]
  %v2146 = vld [vmem:[%s1 + $0x1b2c] sm:$0xf]
  %v2147 = vld [vmem:[%s1 + $0x1b30] sm:$0xf]
  %v2148 = vld [vmem:[%s1 + $0x1b34] sm:$0xf]
  %v2149 = vld [vmem:[%s1 + $0x1b38] sm:$0xf]
  %v2150 = vld [vmem:[%s1 + $0x1b3c] sm:$0xf]
  %v2151 = vld [vmem:[%s1 + $0x1b40] sm:$0xf]
  %v2152 = vld [vmem:[%s1 + $0x1b44] sm:$0xf]
  %v2153 = vld [vmem:[%s1 + $0x1b48] sm:$0xf]
  %v2154 = vld [vmem:[%s1 + $0x1b4c] sm:$0xf]
  %v2155 = vld [vmem:[%s1 + $0x1b50] sm:$0xf]
  %v2156 = vld [vmem:[%s1 + $0x1b54] sm:$0xf]
  %v2157 = vld [vmem:[%s1 + $0x1b58] sm:$0xf]
  %v2158 = vld [vmem:[%s1 + $0x1b5c] sm:$0xf]
  %v2159 = vld [vmem:[%s1 + $0x1b60] sm:$0xf]
  %v2160 = vld [vmem:[%s1 + $0x1b64] sm:$0xf]
  %v2161 = vld [vmem:[%s1 + $0x1b68] sm:$0xf]
  %v2162 = vld [vmem:[%s1 + $0x1b6c] sm:$0xf]
  %v2163 = vld [vmem:[%s1 + $0x1b70] sm:$0xf]
  %v2164 = vld [vmem:[%s1 + $0x1b74] sm:$0xf]
  %v2165 = vld [vmem:[%s1 + $0x1b78] sm:$0xf]
  %v2166 = vld [vmem:[%s1 + $0x1b7c] sm:$0xf]
  %v2167 = vld [vmem:[%s1 + $0x1b80] sm:$0xf]
  %v2168 = vld [vmem:[%s1 + $0x1b84] sm:$0xf]
  %v2169 = vld [vmem:[%s1 + $0x1b88] sm:$0xf]
  %v2170 = vld [vmem:[%s1 + $0x1b8c] sm:$0xf]
  %v2171 = vld [vmem:[%s1 + $0x1b90] sm:$0xf]
  %v2172 = vld [vmem:[%s1 + $0x1b94] sm:$0xf]
  %v2173 = vld [vmem:[%s1 + $0x1b98] sm:$0xf]
  %v2174 = vld [vmem:[%s1 + $0x1b9c] sm:$0xf]
  %v2175 = vld [vmem:[%s1 + $0x1ba0] sm:$0xf]
  %v2176 = vld [vmem:[%s1 + $0x1ba4] sm:$0xf]
  %v2177 = vld [vmem:[%s1 + $0x1ba8] sm:$0xf]
  %v2178 = vld [vmem:[%s1 + $0x1bac] sm:$0xf]
  %v2179 = vld [vmem:[%s1 + $0x1bb0] sm:$0xf]
  %v2180 = vld [vmem:[%s1 + $0x1bb4] sm:$0xf]
  %v2181 = vld [vmem:[%s1 + $0x1bb8] sm:$0xf]
  %v2182 = vld [vmem:[%s1 + $0x1bbc] sm:$0xf]
  %v2183 = vld [vmem:[%s1 + $0x1bc0] sm:$0xf]
  %v2184 = vld [vmem:[%s1 + $0x1bc4] sm:$0xf]
  %v2185 = vld [vmem:[%s1 + $0x1bc8] sm:$0xf]
  %v2186 = vld [vmem:[%s1 + $0x1bcc] sm:$0xf]
  %v2187 = vld [vmem:[%s1 + $0x1bd0] sm:$0xf]
  %v2188 = vld [vmem:[%s1 + $0x1bd4] sm:$0xf]
  %v2189 = vld [vmem:[%s1 + $0x1bd8] sm:$0xf]
  %v2190 = vld [vmem:[%s1 + $0x1bdc] sm:$0xf]
  %v2191 = vld [vmem:[%s1 + $0x1be0] sm:$0xf]
  %v2192 = vld [vmem:[%s1 + $0x1be4] sm:$0xf]
  %v2193 = vld [vmem:[%s1 + $0x1be8] sm:$0xf]
  %v2194 = vld [vmem:[%s1 + $0x1bec] sm:$0xf]
  %v2195 = vld [vmem:[%s1 + $0x1bf0] sm:$0xf]
  %v2196 = vld [vmem:[%s1 + $0x1bf4] sm:$0xf]
  %v2197 = vld [vmem:[%s1 + $0x1bf8] sm:$0xf]
  %v2198 = vld [vmem:[%s1 + $0x1bfc] sm:$0xf]
  %v2199 = vld [vmem:[%s1 + $0x1c00] sm:$0xf]
  %v2200 = vld [vmem:[%s1 + $0x1c04] sm:$0xf]
  %v2201 = vld [vmem:[%s1 + $0x1c08] sm:$0xf]
  %v2202 = vld [vmem:[%s1 + $0x1c0c] sm:$0xf]
  %v2203 = vld [vmem:[%s1 + $0x1c10] sm:$0xf]
  %v2204 = vld [vmem:[%s1 + $0x1c14] sm:$0xf]
  %v2205 = vld [vmem:[%s1 + $0x1c18] sm:$0xf]
  %v2206 = vld [vmem:[%s1 + $0x1c1c] sm:$0xf]
  %v2207 = vld [vmem:[%s1 + $0x1c20] sm:$0xf]
  %v2208 = vld [vmem:[%s1 + $0x1c24] sm:$0xf]
  %v2209 = vld [vmem:[%s1 + $0x1c28] sm:$0xf]
  %v2210 = vld [vmem:[%s1 + $0x1c2c] sm:$0xf]
  %v2211 = vld [vmem:[%s1 + $0x1c30] sm:$0xf]
  %v2212 = vld [vmem:[%s1 + $0x1c34] sm:$0xf]
  %v2213 = vld [vmem:[%s1 + $0x1c38] sm:$0xf]
  %v2214 = vld [vmem:[%s1 + $0x1c3c] sm:$0xf]
  %v2215 = vld [vmem:[%s1 + $0x1c40] sm:$0xf]
  %v2216 = vld [vmem:[%s1 + $0x1c44] sm:$0xf]
  %v2217 = vld [vmem:[%s1 + $0x1c48] sm:$0xf]
  %v2218 = vld [vmem:[%s1 + $0x1c4c] sm:$0xf]
  %v2219 = vld [vmem:[%s1 + $0x1c50] sm:$0xf]
  %v2220 = vld [vmem:[%s1 + $0x1c54] sm:$0xf]
  %v2221 = vld [vmem:[%s1 + $0x1c58] sm:$0xf]
  %v2222 = vld [vmem:[%s1 + $0x1c5c] sm:$0xf]
  %v2223 = vld [vmem:[%s1 + $0x1c60] sm:$0xf]
  %v2224 = vld [vmem:[%s1 + $0x1c64] sm:$0xf]
  %v2225 = vld [vmem:[%s1 + $0x1c68] sm:$0xf]
  %v2226 = vld [vmem:[%s1 + $0x1c6c] sm:$0xf]
  %v2227 = vld [vmem:[%s1 + $0x1c70] sm:$0xf]
  %v2228 = vld [vmem:[%s1 + $0x1c74] sm:$0xf]
  %v2229 = vld [vmem:[%s1 + $0x1c78] sm:$0xf]
  %v2230 = vld [vmem:[%s1 + $0x1c7c] sm:$0xf]
  %v2231 = vld [vmem:[%s1 + $0x1c80] sm:$0xf]
  %v2232 = vld [vmem:[%s1 + $0x1c84] sm:$0xf]
  %v2233 = vld [vmem:[%s1 + $0x1c88] sm:$0xf]
  %v2234 = vld [vmem:[%s1 + $0x1c8c] sm:$0xf]
  %v2235 = vld [vmem:[%s1 + $0x1c90] sm:$0xf]
  %v2236 = vld [vmem:[%s1 + $0x1c94] sm:$0xf]
  %v2237 = vld [vmem:[%s1 + $0x1c98] sm:$0xf]
  %v2238 = vld [vmem:[%s1 + $0x1c9c] sm:$0xf]
  %v2239 = vld [vmem:[%s1 + $0x1ca0] sm:$0xf]
  %v2240 = vld [vmem:[%s1 + $0x1ca4] sm:$0xf]
  %v2241 = vld [vmem:[%s1 + $0x1ca8] sm:$0xf]
  %v2242 = vld [vmem:[%s1 + $0x1cac] sm:$0xf]
  %v2243 = vld [vmem:[%s1 + $0x1cb0] sm:$0xf]
  %v2244 = vld [vmem:[%s1 + $0x1cb4] sm:$0xf]
  %v2245 = vld [vmem:[%s1 + $0x1cb8] sm:$0xf]
  %v2246 = vld [vmem:[%s1 + $0x1cbc] sm:$0xf]
  %v2247 = vld [vmem:[%s1 + $0x1cc0] sm:$0xf]
  %v2248 = vld [vmem:[%s1 + $0x1cc4] sm:$0xf]
  %v2249 = vld [vmem:[%s1 + $0x1cc8] sm:$0xf]
  %v2250 = vld [vmem:[%s1 + $0x1ccc] sm:$0xf]
  %v2251 = vld [vmem:[%s1 + $0x1cd0] sm:$0xf]
  %v2252 = vld [vmem:[%s1 + $0x1cd4] sm:$0xf]
  %v2253 = vld [vmem:[%s1 + $0x1cd8] sm:$0xf]
  %v2254 = vld [vmem:[%s1 + $0x1cdc] sm:$0xf]
  %v2255 = vld [vmem:[%s1 + $0x1ce0] sm:$0xf]
  %v2256 = vld [vmem:[%s1 + $0x1ce4] sm:$0xf]
  %v2257 = vld [vmem:[%s1 + $0x1ce8] sm:$0xf]
  %v2258 = vld [vmem:[%s1 + $0x1cec] sm:$0xf]
  %v2259 = vld [vmem:[%s1 + $0x1cf0] sm:$0xf]
  %v2260 = vld [vmem:[%s1 + $0x1cf4] sm:$0xf]
  %v2261 = vld [vmem:[%s1 + $0x1cf8] sm:$0xf]
  %v2262 = vld [vmem:[%s1 + $0x1cfc] sm:$0xf]
  %v2263 = vld [vmem:[%s1 + $0x1d00] sm:$0xf]
  %v2264 = vld [vmem:[%s1 + $0x1d04] sm:$0xf]
  %v2265 = vld [vmem:[%s1 + $0x1d08] sm:$0xf]
  %v2266 = vld [vmem:[%s1 + $0x1d0c] sm:$0xf]
  %v2267 = vld [vmem:[%s1 + $0x1d10] sm:$0xf]
  %v2268 = vld [vmem:[%s1 + $0x1d14] sm:$0xf]
  %v2269 = vld [vmem:[%s1 + $0x1d18] sm:$0xf]
  %v2270 = vld [vmem:[%s1 + $0x1d1c] sm:$0xf]
  %v2271 = vld [vmem:[%s1 + $0x1d20] sm:$0xf]
  %v2272 = vld [vmem:[%s1 + $0x1d24] sm:$0xf]
  %v2273 = vld [vmem:[%s1 + $0x1d28] sm:$0xf]
  %v2274 = vld [vmem:[%s1 + $0x1d2c] sm:$0xf]
  %v2275 = vld [vmem:[%s1 + $0x1d30] sm:$0xf]
  %v2276 = vld [vmem:[%s1 + $0x1d34] sm:$0xf]
  %v2277 = vld [vmem:[%s1 + $0x1d38] sm:$0xf]
  %v2278 = vld [vmem:[%s1 + $0x1d3c] sm:$0xf]
  %v2279 = vld [vmem:[%s1 + $0x1d40] sm:$0xf]
  %v2280 = vld [vmem:[%s1 + $0x1d44] sm:$0xf]
  %v2281 = vld [vmem:[%s1 + $0x1d48] sm:$0xf]
  %v2282 = vld [vmem:[%s1 + $0x1d4c] sm:$0xf]
  %v2283 = vld [vmem:[%s1 + $0x1d50] sm:$0xf]
  %v2284 = vld [vmem:[%s1 + $0x1d54] sm:$0xf]
  %v2285 = vld [vmem:[%s1 + $0x1d58] sm:$0xf]
  %v2286 = vld [vmem:[%s1 + $0x1d5c] sm:$0xf]
  %v2287 = vld [vmem:[%s1 + $0x1d60] sm:$0xf]
  %v2288 = vld [vmem:[%s1 + $0x1d64] sm:$0xf]
  %v2289 = vld [vmem:[%s1 + $0x1d68] sm:$0xf]
  %v2290 = vld [vmem:[%s1 + $0x1d6c] sm:$0xf]
  %v2291 = vld [vmem:[%s1 + $0x1d70] sm:$0xf]
  %v2292 = vld [vmem:[%s1 + $0x1d74] sm:$0xf]
  %v2293 = vld [vmem:[%s1 + $0x1d78] sm:$0xf]
  %v2294 = vld [vmem:[%s1 + $0x1d7c] sm:$0xf]
  %v2295 = vld [vmem:[%s1 + $0x1d80] sm:$0xf]
  %v2296 = vld [vmem:[%s1 + $0x1d84] sm:$0xf]
  %v2297 = vld [vmem:[%s1 + $0x1d88] sm:$0xf]
  %v2298 = vld [vmem:[%s1 + $0x1d8c] sm:$0xf]
  %v2299 = vld [vmem:[%s1 + $0x1d90] sm:$0xf]
  %v2300 = vld [vmem:[%s1 + $0x1d94] sm:$0xf]
  %v2301 = vld [vmem:[%s1 + $0x1d98] sm:$0xf]
  %v2302 = vld [vmem:[%s1 + $0x1d9c] sm:$0xf]
  %v2303 = vld [vmem:[%s1 + $0x1da0] sm:$0xf]
  %v2304 = vld [vmem:[%s1 + $0x1da4] sm:$0xf]
  %v2305 = vld [vmem:[%s1 + $0x1da8] sm:$0xf]
  %v2306 = vld [vmem:[%s1 + $0x1dac] sm:$0xf]
  %v2307 = vld [vmem:[%s1 + $0x1db0] sm:$0xf]
  %v2308 = vld [vmem:[%s1 + $0x1db4] sm:$0xf]
  %v2309 = vld [vmem:[%s1 + $0x1db8] sm:$0xf]
  %v2310 = vld [vmem:[%s1 + $0x1dbc] sm:$0xf]
  %v2311 = vld [vmem:[%s1 + $0x1dc0] sm:$0xf]
  %v2312 = vld [vmem:[%s1 + $0x1dc4] sm:$0xf]
  %v2313 = vld [vmem:[%s1 + $0x1dc8] sm:$0xf]
  %v2314 = vld [vmem:[%s1 + $0x1dcc] sm:$0xf]
  %v2315 = vld [vmem:[%s1 + $0x1dd0] sm:$0xf]
  %v2316 = vld [vmem:[%s1 + $0x1dd4] sm:$0xf]
  %v2317 = vld [vmem:[%s1 + $0x1dd8] sm:$0xf]
  %v2318 = vld [vmem:[%s1 + $0x1ddc] sm:$0xf]
  %v2319 = vld [vmem:[%s1 + $0x1de0] sm:$0xf]
  %v2320 = vld [vmem:[%s1 + $0x1de4] sm:$0xf]
  %v2321 = vld [vmem:[%s1 + $0x1de8] sm:$0xf]
  %v2322 = vld [vmem:[%s1 + $0x1dec] sm:$0xf]
  %v2323 = vld [vmem:[%s1 + $0x1df0] sm:$0xf]
  %v2324 = vld [vmem:[%s1 + $0x1df4] sm:$0xf]
  %v2325 = vld [vmem:[%s1 + $0x1df8] sm:$0xf]
  %v2326 = vld [vmem:[%s1 + $0x1dfc] sm:$0xf]
  %v2327 = vld [vmem:[%s1 + $0x1e00] sm:$0xf]
  %v2328 = vld [vmem:[%s1 + $0x1e04] sm:$0xf]
  %v2329 = vld [vmem:[%s1 + $0x1e08] sm:$0xf]
  %v2330 = vld [vmem:[%s1 + $0x1e0c] sm:$0xf]
  %v2331 = vld [vmem:[%s1 + $0x1e10] sm:$0xf]
  %v2332 = vld [vmem:[%s1 + $0x1e14] sm:$0xf]
  %v2333 = vld [vmem:[%s1 + $0x1e18] sm:$0xf]
  %v2334 = vld [vmem:[%s1 + $0x1e1c] sm:$0xf]
  %v2335 = vld [vmem:[%s1 + $0x1e20] sm:$0xf]
  %v2336 = vld [vmem:[%s1 + $0x1e24] sm:$0xf]
  %v2337 = vld [vmem:[%s1 + $0x1e28] sm:$0xf]
  %v2338 = vld [vmem:[%s1 + $0x1e2c] sm:$0xf]
  %v2339 = vld [vmem:[%s1 + $0x1e30] sm:$0xf]
  %v2340 = vld [vmem:[%s1 + $0x1e34] sm:$0xf]
  %v2341 = vld [vmem:[%s1 + $0x1e38] sm:$0xf]
  %v2342 = vld [vmem:[%s1 + $0x1e3c] sm:$0xf]
  %v2343 = vld [vmem:[%s1 + $0x1e40] sm:$0xf]
  %v2344 = vld [vmem:[%s1 + $0x1e44] sm:$0xf]
  %v2345 = vld [vmem:[%s1 + $0x1e48] sm:$0xf]
  %v2346 = vld [vmem:[%s1 + $0x1e4c] sm:$0xf]
  %v2347 = vld [vmem:[%s1 + $0x1e50] sm:$0xf]
  %v2348 = vld [vmem:[%s1 + $0x1e54] sm:$0xf]
  %v2349 = vld [vmem:[%s1 + $0x1e58] sm:$0xf]
  %v2350 = vld [vmem:[%s1 + $0x1e5c] sm:$0xf]
  %v2351 = vld [vmem:[%s1 + $0x1e60] sm:$0xf]
  %v2352 = vld [vmem:[%s1 + $0x1e64] sm:$0xf]
  %v2353 = vld [vmem:[%s1 + $0x1e68] sm:$0xf]
  %v2354 = vld [vmem:[%s1 + $0x1e6c] sm:$0xf]
  %v2355 = vld [vmem:[%s1 + $0x1e70] sm:$0xf]
  %v2356 = vld [vmem:[%s1 + $0x1e74] sm:$0xf]
  %v2357 = vld [vmem:[%s1 + $0x1e78] sm:$0xf]
  %v2358 = vld [vmem:[%s1 + $0x1e7c] sm:$0xf]
  %v2359 = vld [vmem:[%s1 + $0x1e80] sm:$0xf]
  %v2360 = vld [vmem:[%s1 + $0x1e84] sm:$0xf]
  %v2361 = vld [vmem:[%s1 + $0x1e88] sm:$0xf]
  %v2362 = vld [vmem:[%s1 + $0x1e8c] sm:$0xf]
  %v2363 = vld [vmem:[%s1 + $0x1e90] sm:$0xf]
  %v2364 = vld [vmem:[%s1 + $0x1e94] sm:$0xf]
  %v2365 = vld [vmem:[%s1 + $0x1e98] sm:$0xf]
  %v2366 = vld [vmem:[%s1 + $0x1e9c] sm:$0xf]
  %v2367 = vld [vmem:[%s1 + $0x1ea0] sm:$0xf]
  %v2368 = vld [vmem:[%s1 + $0x1ea4] sm:$0xf]
  %v2369 = vld [vmem:[%s1 + $0x1ea8] sm:$0xf]
  %v2370 = vld [vmem:[%s1 + $0x1eac] sm:$0xf]
  %v2371 = vld [vmem:[%s1 + $0x1eb0] sm:$0xf]
  %v2372 = vld [vmem:[%s1 + $0x1eb4] sm:$0xf]
  %v2373 = vld [vmem:[%s1 + $0x1eb8] sm:$0xf]
  %v2374 = vld [vmem:[%s1 + $0x1ebc] sm:$0xf]
  %v2375 = vld [vmem:[%s1 + $0x1ec0] sm:$0xf]
  %v2376 = vld [vmem:[%s1 + $0x1ec4] sm:$0xf]
  %v2377 = vld [vmem:[%s1 + $0x1ec8] sm:$0xf]
  %v2378 = vld [vmem:[%s1 + $0x1ecc] sm:$0xf]
  %v2379 = vld [vmem:[%s1 + $0x1ed0] sm:$0xf]
  %v2380 = vld [vmem:[%s1 + $0x1ed4] sm:$0xf]
  %v2381 = vld [vmem:[%s1 + $0x1ed8] sm:$0xf]
  %v2382 = vld [vmem:[%s1 + $0x1edc] sm:$0xf]
  %v2383 = vld [vmem:[%s1 + $0x1ee0] sm:$0xf]
  %v2384 = vld [vmem:[%s1 + $0x1ee4] sm:$0xf]
  %v2385 = vld [vmem:[%s1 + $0x1ee8] sm:$0xf]
  %v2386 = vld [vmem:[%s1 + $0x1eec] sm:$0xf]
  %v2387 = vld [vmem:[%s1 + $0x1ef0] sm:$0xf]
  %v2388 = vld [vmem:[%s1 + $0x1ef4] sm:$0xf]
  %v2389 = vld [vmem:[%s1 + $0x1ef8] sm:$0xf]
  %v2390 = vld [vmem:[%s1 + $0x1efc] sm:$0xf]
  %v2391 = vld [vmem:[%s1 + $0x1f00] sm:$0xf]
  %v2392 = vld [vmem:[%s1 + $0x1f04] sm:$0xf]
  %v2393 = vld [vmem:[%s1 + $0x1f08] sm:$0xf]
  %v2394 = vld [vmem:[%s1 + $0x1f0c] sm:$0xf]
  %v2395 = vld [vmem:[%s1 + $0x1f10] sm:$0xf]
  %v2396 = vld [vmem:[%s1 + $0x1f14] sm:$0xf]
  %v2397 = vld [vmem:[%s1 + $0x1f18] sm:$0xf]
  %v2398 = vld [vmem:[%s1 + $0x1f1c] sm:$0xf]
  %v2399 = vld [vmem:[%s1 + $0x1f20] sm:$0xf]
  %v2400 = vld [vmem:[%s1 + $0x1f24] sm:$0xf]
  %v2401 = vld [vmem:[%s1 + $0x1f28] sm:$0xf]
  %v2402 = vld [vmem:[%s1 + $0x1f2c] sm:$0xf]
  %v2403 = vld [vmem:[%s1 + $0x1f30] sm:$0xf]
  %v2404 = vld [vmem:[%s1 + $0x1f34] sm:$0xf]
  %v2405 = vld [vmem:[%s1 + $0x1f38] sm:$0xf]
  %v2406 = vld [vmem:[%s1 + $0x1f3c] sm:$0xf]
  %v2407 = vld [vmem:[%s1 + $0x1f40] sm:$0xf]
  %v2408 = vld [vmem:[%s1 + $0x1f44] sm:$0xf]
  %v2409 = vld [vmem:[%s1 + $0x1f48] sm:$0xf]
  %v2410 = vld [vmem:[%s1 + $0x1f4c] sm:$0xf]
  %v2411 = vld [vmem:[%s1 + $0x1f50] sm:$0xf]
  %v2412 = vld [vmem:[%s1 + $0x1f54] sm:$0xf]
  %v2413 = vld [vmem:[%s1 + $0x1f58] sm:$0xf]
  %v2414 = vld [vmem:[%s1 + $0x1f5c] sm:$0xf]
  %v2415 = vld [vmem:[%s1 + $0x1f60] sm:$0xf]
  %v2416 = vld [vmem:[%s1 + $0x1f64] sm:$0xf]
  %v2417 = vld [vmem:[%s1 + $0x1f68] sm:$0xf]
  %v2418 = vld [vmem:[%s1 + $0x1f6c] sm:$0xf]
  %v2419 = vld [vmem:[%s1 + $0x1f70] sm:$0xf]
  %v2420 = vld [vmem:[%s1 + $0x1f74] sm:$0xf]
  %v2421 = vld [vmem:[%s1 + $0x1f78] sm:$0xf]
  %v2422 = vld [vmem:[%s1 + $0x1f7c] sm:$0xf]
  %v2423 = vld [vmem:[%s1 + $0x1f80] sm:$0xf]
  %v2424 = vld [vmem:[%s1 + $0x1f84] sm:$0xf]
  %v2425 = vld [vmem:[%s1 + $0x1f88] sm:$0xf]
  %v2426 = vld [vmem:[%s1 + $0x1f8c] sm:$0xf]
  %v2427 = vld [vmem:[%s1 + $0x1f90] sm:$0xf]
  %v2428 = vld [vmem:[%s1 + $0x1f94] sm:$0xf]
  %v2429 = vld [vmem:[%s1 + $0x1f98] sm:$0xf]
  %v2430 = vld [vmem:[%s1 + $0x1f9c] sm:$0xf]
  %v2431 = vld [vmem:[%s1 + $0x1fa0] sm:$0xf]
  %v2432 = vld [vmem:[%s1 + $0x1fa4] sm:$0xf]
  %v2433 = vld [vmem:[%s1 + $0x1fa8] sm:$0xf]
  %v2434 = vld [vmem:[%s1 + $0x1fac] sm:$0xf]
  %v2435 = vld [vmem:[%s1 + $0x1fb0] sm:$0xf]
  %v2436 = vld [vmem:[%s1 + $0x1fb4] sm:$0xf]
  %v2437 = vld [vmem:[%s1 + $0x1fb8] sm:$0xf]
  %v2438 = vld [vmem:[%s1 + $0x1fbc] sm:$0xf]
  %v2439 = vld [vmem:[%s1 + $0x1fc0] sm:$0xf]
  %v2440 = vld [vmem:[%s1 + $0x1fc4] sm:$0xf]
  %v2441 = vld [vmem:[%s1 + $0x1fc8] sm:$0xf]
  %v2442 = vld [vmem:[%s1 + $0x1fcc] sm:$0xf]
  %v2443 = vld [vmem:[%s1 + $0x1fd0] sm:$0xf]
  %v2444 = vld [vmem:[%s1 + $0x1fd4] sm:$0xf]
  %v2445 = vld [vmem:[%s1 + $0x1fd8] sm:$0xf]
  %v2446 = vld [vmem:[%s1 + $0x1fdc] sm:$0xf]
  %v2447 = vld [vmem:[%s1 + $0x1fe0] sm:$0xf]
  %v2448 = vld [vmem:[%s1 + $0x1fe4] sm:$0xf]
  %v2449 = vld [vmem:[%s1 + $0x1fe8] sm:$0xf]
  %v2450 = vld [vmem:[%s1 + $0x1fec] sm:$0xf]
  %v2451 = vld [vmem:[%s1 + $0x1ff0] sm:$0xf]
  %v2452 = vld [vmem:[%s1 + $0x1ff4] sm:$0xf]
  %v2453 = vld [vmem:[%s1 + $0x1ff8] sm:$0xf]
  %v2454 = vld [vmem:[%s1 + $0x1ffc] sm:$0xf]
  %v2455 = vld [vmem:[%s1 + $0x2000] sm:$0xf]
  %v2456 = vld [vmem:[%s1 + $0x2004] sm:$0xf]
  %v2457 = vld [vmem:[%s1 + $0x2008] sm:$0xf]
  %v2458 = vld [vmem:[%s1 + $0x200c] sm:$0xf]
  %v2459 = vld [vmem:[%s1 + $0x2010] sm:$0xf]
  %v2460 = vld [vmem:[%s1 + $0x2014] sm:$0xf]
  %v2461 = vld [vmem:[%s1 + $0x2018] sm:$0xf]
  %v2462 = vld [vmem:[%s1 + $0x201c] sm:$0xf]
  %v2463 = vld [vmem:[%s1 + $0x2020] sm:$0xf]
  %v2464 = vld [vmem:[%s1 + $0x2024] sm:$0xf]
  %v2465 = vld [vmem:[%s1 + $0x2028] sm:$0xf]
  %v2466 = vld [vmem:[%s1 + $0x202c] sm:$0xf]
  %v2467 = vld [vmem:[%s1 + $0x2030] sm:$0xf]
  %v2468 = vld [vmem:[%s1 + $0x2034] sm:$0xf]
  %v2469 = vld [vmem:[%s1 + $0x2038] sm:$0xf]
  %v2470 = vld [vmem:[%s1 + $0x203c] sm:$0xf]
  %v2471 = vld [vmem:[%s1 + $0x2040] sm:$0xf]
  %v2472 = vld [vmem:[%s1 + $0x2044] sm:$0xf]
  %v2473 = vld [vmem:[%s1 + $0x2048] sm:$0xf]
  %v2474 = vld [vmem:[%s1 + $0x204c] sm:$0xf]
  %v2475 = vld [vmem:[%s1 + $0x2050] sm:$0xf]
  %v2476 = vld [vmem:[%s1 + $0x2054] sm:$0xf]
  %v2477 = vld [vmem:[%s1 + $0x2058] sm:$0xf]
  %v2478 = vld [vmem:[%s1 + $0x205c] sm:$0xf]
  %v2479 = vld [vmem:[%s1 + $0x2060] sm:$0xf]
  %v2480 = vld [vmem:[%s1 + $0x2064] sm:$0xf]
  %v2481 = vld [vmem:[%s1 + $0x2068] sm:$0xf]
  %v2482 = vld [vmem:[%s1 + $0x206c] sm:$0xf]
  %v2483 = vld [vmem:[%s1 + $0x2070] sm:$0xf]
  %v2484 = vld [vmem:[%s1 + $0x2074] sm:$0xf]
  %v2485 = vld [vmem:[%s1 + $0x2078] sm:$0xf]
  %v2486 = vld [vmem:[%s1 + $0x207c] sm:$0xf]
  %v2487 = vld [vmem:[%s1 + $0x2080] sm:$0xf]
  %v2488 = vld [vmem:[%s1 + $0x2084] sm:$0xf]
  %v2489 = vld [vmem:[%s1 + $0x2088] sm:$0xf]
  %v2490 = vld [vmem:[%s1 + $0x208c] sm:$0xf]
  %v2491 = vld [vmem:[%s1 + $0x2090] sm:$0xf]
  %v2492 = vld [vmem:[%s1 + $0x2094] sm:$0xf]
  %v2493 = vld [vmem:[%s1 + $0x2098] sm:$0xf]
  %v2494 = vld [vmem:[%s1 + $0x209c] sm:$0xf]
  %v2495 = vld [vmem:[%s1 + $0x20a0] sm:$0xf]
  %v2496 = vld [vmem:[%s1 + $0x20a4] sm:$0xf]
  %v2497 = vld [vmem:[%s1 + $0x20a8] sm:$0xf]
  %v2498 = vld [vmem:[%s1 + $0x20ac] sm:$0xf]
  %v2499 = vld [vmem:[%s1 + $0x20b0] sm:$0xf]
  %v2500 = vld [vmem:[%s1 + $0x20b4] sm:$0xf]
  %v2501 = vld [vmem:[%s1 + $0x20b8] sm:$0xf]
  %v2502 = vld [vmem:[%s1 + $0x20bc] sm:$0xf]
  %v2503 = vld [vmem:[%s1 + $0x20c0] sm:$0xf]
  %v2504 = vld [vmem:[%s1 + $0x20c4] sm:$0xf]
  %v2505 = vld [vmem:[%s1 + $0x20c8] sm:$0xf]
  %v2506 = vld [vmem:[%s1 + $0x20cc] sm:$0xf]
  %v2507 = vld [vmem:[%s1 + $0x20d0] sm:$0xf]
  %v2508 = vld [vmem:[%s1 + $0x20d4] sm:$0xf]
  %v2509 = vld [vmem:[%s1 + $0x20d8] sm:$0xf]
  %v2510 = vld [vmem:[%s1 + $0x20dc] sm:$0xf]
  %v2511 = vld [vmem:[%s1 + $0x20e0] sm:$0xf]
  %v2512 = vld [vmem:[%s1 + $0x20e4] sm:$0xf]
  %v2513 = vld [vmem:[%s1 + $0x20e8] sm:$0xf]
  %v2514 = vld [vmem:[%s1 + $0x20ec] sm:$0xf]
  %v2515 = vld [vmem:[%s1 + $0x20f0] sm:$0xf]
  %v2516 = vld [vmem:[%s1 + $0x20f4] sm:$0xf]
  %v2517 = vld [vmem:[%s1 + $0x20f8] sm:$0xf]
  %v2518 = vld [vmem:[%s1 + $0x20fc] sm:$0xf]
  %v2519 = vld [vmem:[%s1 + $0x2100] sm:$0xf]
  %v2520 = vld [vmem:[%s1 + $0x2104] sm:$0xf]
  %v2521 = vld [vmem:[%s1 + $0x2108] sm:$0xf]
  %v2522 = vld [vmem:[%s1 + $0x210c] sm:$0xf]
  %v2523 = vld [vmem:[%s1 + $0x2110] sm:$0xf]
  %v2524 = vld [vmem:[%s1 + $0x2114] sm:$0xf]
  %v2525 = vld [vmem:[%s1 + $0x2118] sm:$0xf]
  %v2526 = vld [vmem:[%s1 + $0x211c] sm:$0xf]
  %v2527 = vld [vmem:[%s1 + $0x2120] sm:$0xf]
  %v2528 = vld [vmem:[%s1 + $0x2124] sm:$0xf]
  %v2529 = vld [vmem:[%s1 + $0x2128] sm:$0xf]
  %v2530 = vld [vmem:[%s1 + $0x212c] sm:$0xf]
  %v2531 = vld [vmem:[%s1 + $0x2130] sm:$0xf]
  %v2532 = vld [vmem:[%s1 + $0x2134] sm:$0xf]
  %v2533 = vld [vmem:[%s1 + $0x2138] sm:$0xf]
  %v2534 = vld [vmem:[%s1 + $0x213c] sm:$0xf]
  %v2535 = vld [vmem:[%s1 + $0x2140] sm:$0xf]
  %v2536 = vld [vmem:[%s1 + $0x2144] sm:$0xf]
  %v2537 = vld [vmem:[%s1 + $0x2148] sm:$0xf]
  %v2538 = vld [vmem:[%s1 + $0x214c] sm:$0xf]
  %v2539 = vld [vmem:[%s1 + $0x2150] sm:$0xf]
  %v2540 = vld [vmem:[%s1 + $0x2154] sm:$0xf]
  %v2541 = vld [vmem:[%s1 + $0x2158] sm:$0xf]
  %v2542 = vld [vmem:[%s1 + $0x215c] sm:$0xf]
  %v2543 = vld [vmem:[%s1 + $0x2160] sm:$0xf]
  %v2544 = vld [vmem:[%s1 + $0x2164] sm:$0xf]
  %v2545 = vld [vmem:[%s1 + $0x2168] sm:$0xf]
  %v2546 = vld [vmem:[%s1 + $0x216c] sm:$0xf]
  %v2547 = vld [vmem:[%s1 + $0x2170] sm:$0xf]
  %v2548 = vld [vmem:[%s1 + $0x2174] sm:$0xf]
  %v2549 = vld [vmem:[%s1 + $0x2178] sm:$0xf]
  %v2550 = vld [vmem:[%s1 + $0x217c] sm:$0xf]
  %v2551 = vld [vmem:[%s1 + $0x2180] sm:$0xf]
  %v2552 = vld [vmem:[%s1 + $0x2184] sm:$0xf]
  %v2553 = vld [vmem:[%s1 + $0x2188] sm:$0xf]
  %v2554 = vld [vmem:[%s1 + $0x218c] sm:$0xf]
  %v2555 = vld [vmem:[%s1 + $0x2190] sm:$0xf]
  %v2556 = vld [vmem:[%s1 + $0x2194] sm:$0xf]
  %v2557 = vld [vmem:[%s1 + $0x2198] sm:$0xf]
  %v2558 = vld [vmem:[%s1 + $0x219c] sm:$0xf]
  %v2559 = vld [vmem:[%s1 + $0x21a0] sm:$0xf]
  %v2560 = vld [vmem:[%s1 + $0x21a4] sm:$0xf]
  %v2561 = vld [vmem:[%s1 + $0x21a8] sm:$0xf]
  %v2562 = vld [vmem:[%s1 + $0x21ac] sm:$0xf]
  %v2563 = vld [vmem:[%s1 + $0x21b0] sm:$0xf]
  %v2564 = vld [vmem:[%s1 + $0x21b4] sm:$0xf]
  %v2565 = vld [vmem:[%s1 + $0x21b8] sm:$0xf]
  %v2566 = vld [vmem:[%s1 + $0x21bc] sm:$0xf]
  %v2567 = vld [vmem:[%s1 + $0x21c0] sm:$0xf]
  %v2568 = vld [vmem:[%s1 + $0x21c4] sm:$0xf]
  %v2569 = vld [vmem:[%s1 + $0x21c8] sm:$0xf]
  %v2570 = vld [vmem:[%s1 + $0x21cc] sm:$0xf]
  %v2571 = vld [vmem:[%s1 + $0x21d0] sm:$0xf]
  %v2572 = vld [vmem:[%s1 + $0x21d4] sm:$0xf]
  %v2573 = vld [vmem:[%s1 + $0x21d8] sm:$0xf]
  %v2574 = vld [vmem:[%s1 + $0x21dc] sm:$0xf]
  %v2575 = vld [vmem:[%s1 + $0x21e0] sm:$0xf]
  %v2576 = vld [vmem:[%s1 + $0x21e4] sm:$0xf]
  %v2577 = vld [vmem:[%s1 + $0x21e8] sm:$0xf]
  %v2578 = vld [vmem:[%s1 + $0x21ec] sm:$0xf]
  %v2579 = vld [vmem:[%s1 + $0x21f0] sm:$0xf]
  %v2580 = vld [vmem:[%s1 + $0x21f4] sm:$0xf]
  %v2581 = vld [vmem:[%s1 + $0x21f8] sm:$0xf]
  %v2582 = vld [vmem:[%s1 + $0x21fc] sm:$0xf]
  %v2583 = vld [vmem:[%s1 + $0x2200] sm:$0xf]
  %v2584 = vld [vmem:[%s1 + $0x2204] sm:$0xf]
  %v2585 = vld [vmem:[%s1 + $0x2208] sm:$0xf]
  %v2586 = vld [vmem:[%s1 + $0x220c] sm:$0xf]
  %v2587 = vld [vmem:[%s1 + $0x2210] sm:$0xf]
  %v2588 = vld [vmem:[%s1 + $0x2214] sm:$0xf]
  %v2589 = vld [vmem:[%s1 + $0x2218] sm:$0xf]
  %v2590 = vld [vmem:[%s1 + $0x221c] sm:$0xf]
  %v2591 = vld [vmem:[%s1 + $0x2220] sm:$0xf]
  %v2592 = vld [vmem:[%s1 + $0x2224] sm:$0xf]
  %v2593 = vld [vmem:[%s1 + $0x2228] sm:$0xf]
  %v2594 = vld [vmem:[%s1 + $0x222c] sm:$0xf]
  %v2595 = vld [vmem:[%s1 + $0x2230] sm:$0xf]
  %v2596 = vld [vmem:[%s1 + $0x2234] sm:$0xf]
  %v2597 = vld [vmem:[%s1 + $0x2238] sm:$0xf]
  %v2598 = vld [vmem:[%s1 + $0x223c] sm:$0xf]
  %v2599 = vld [vmem:[%s1 + $0x2240] sm:$0xf]
  %v2600 = vld [vmem:[%s1 + $0x2244] sm:$0xf]
  %v2601 = vld [vmem:[%s1 + $0x2248] sm:$0xf]
  %v2602 = vld [vmem:[%s1 + $0x224c] sm:$0xf]
  %v2603 = vld [vmem:[%s1 + $0x2250] sm:$0xf]
  %v2604 = vld [vmem:[%s1 + $0x2254] sm:$0xf]
  %v2605 = vld [vmem:[%s1 + $0x2258] sm:$0xf]
  %v2606 = vld [vmem:[%s1 + $0x225c] sm:$0xf]
  %v2607 = vld [vmem:[%s1 + $0x2260] sm:$0xf]
  %v2608 = vld [vmem:[%s1 + $0x2264] sm:$0xf]
  %v2609 = vld [vmem:[%s1 + $0x2268] sm:$0xf]
  %v2610 = vld [vmem:[%s1 + $0x226c] sm:$0xf]
  %v2611 = vld [vmem:[%s1 + $0x2270] sm:$0xf]
  %v2612 = vld [vmem:[%s1 + $0x2274] sm:$0xf]
  %v2613 = vld [vmem:[%s1 + $0x2278] sm:$0xf]
  %v2614 = vld [vmem:[%s1 + $0x227c] sm:$0xf]
  %v2615 = vld [vmem:[%s1 + $0x2280] sm:$0xf]
  %v2616 = vld [vmem:[%s1 + $0x2284] sm:$0xf]
  %v2617 = vld [vmem:[%s1 + $0x2288] sm:$0xf]
  %v2618 = vld [vmem:[%s1 + $0x228c] sm:$0xf]
  %v2619 = vld [vmem:[%s1 + $0x2290] sm:$0xf]
  %v2620 = vld [vmem:[%s1 + $0x2294] sm:$0xf]
  %v2621 = vld [vmem:[%s1 + $0x2298] sm:$0xf]
  %v2622 = vld [vmem:[%s1 + $0x229c] sm:$0xf]
  %v2623 = vld [vmem:[%s1 + $0x22a0] sm:$0xf]
  %v2624 = vld [vmem:[%s1 + $0x22a4] sm:$0xf]
  %v2625 = vld [vmem:[%s1 + $0x22a8] sm:$0xf]
  %v2626 = vld [vmem:[%s1 + $0x22ac] sm:$0xf]
  %v2627 = vld [vmem:[%s1 + $0x22b0] sm:$0xf]
  %v2628 = vld [vmem:[%s1 + $0x22b4] sm:$0xf]
  %v2629 = vld [vmem:[%s1 + $0x22b8] sm:$0xf]
  %v2630 = vld [vmem:[%s1 + $0x22bc] sm:$0xf]
  %v2631 = vld [vmem:[%s1 + $0x22c0] sm:$0xf]
  %v2632 = vld [vmem:[%s1 + $0x22c4] sm:$0xf]
  %v2633 = vld [vmem:[%s1 + $0x22c8] sm:$0xf]
  %v2634 = vld [vmem:[%s1 + $0x22cc] sm:$0xf]
  %v2635 = vld [vmem:[%s1 + $0x22d0] sm:$0xf]
  %v2636 = vld [vmem:[%s1 + $0x22d4] sm:$0xf]
  %v2637 = vld [vmem:[%s1 + $0x22d8] sm:$0xf]
  %v2638 = vld [vmem:[%s1 + $0x22dc] sm:$0xf]
  %v2639 = vld [vmem:[%s1 + $0x22e0] sm:$0xf]
  %v2640 = vld [vmem:[%s1 + $0x22e4] sm:$0xf]
  %v2641 = vld [vmem:[%s1 + $0x22e8] sm:$0xf]
  %v2642 = vld [vmem:[%s1 + $0x22ec] sm:$0xf]
  %v2643 = vld [vmem:[%s1 + $0x22f0] sm:$0xf]
  %v2644 = vld [vmem:[%s1 + $0x22f4] sm:$0xf]
  %v2645 = vld [vmem:[%s1 + $0x22f8] sm:$0xf]
  %v2646 = vld [vmem:[%s1 + $0x22fc] sm:$0xf]
  %v2647 = vld [vmem:[%s1 + $0x2300] sm:$0xf]
  %v2648 = vld [vmem:[%s1 + $0x2304] sm:$0xf]
  %v2649 = vld [vmem:[%s1 + $0x2308] sm:$0xf]
  %v2650 = vld [vmem:[%s1 + $0x230c] sm:$0xf]
  %v2651 = vld [vmem:[%s1 + $0x2310] sm:$0xf]
  %v2652 = vld [vmem:[%s1 + $0x2314] sm:$0xf]
  %v2653 = vld [vmem:[%s1 + $0x2318] sm:$0xf]
  %v2654 = vld [vmem:[%s1 + $0x231c] sm:$0xf]
  %v2655 = vld [vmem:[%s1 + $0x2320] sm:$0xf]
  %v2656 = vld [vmem:[%s1 + $0x2324] sm:$0xf]
  %v2657 = vld [vmem:[%s1 + $0x2328] sm:$0xf]
  %v2658 = vld [vmem:[%s1 + $0x232c] sm:$0xf]
  %v2659 = vld [vmem:[%s1 + $0x2330] sm:$0xf]
  %v2660 = vld [vmem:[%s1 + $0x2334] sm:$0xf]
  %v2661 = vld [vmem:[%s1 + $0x2338] sm:$0xf]
  %v2662 = vld [vmem:[%s1 + $0x233c] sm:$0xf]
  %v2663 = vld [vmem:[%s1 + $0x2340] sm:$0xf]
  %v2664 = vld [vmem:[%s1 + $0x2344] sm:$0xf]
  %v2665 = vld [vmem:[%s1 + $0x2348] sm:$0xf]
  %v2666 = vld [vmem:[%s1 + $0x234c] sm:$0xf]
  %v2667 = vld [vmem:[%s1 + $0x2350] sm:$0xf]
  %v2668 = vld [vmem:[%s1 + $0x2354] sm:$0xf]
  %v2669 = vld [vmem:[%s1 + $0x2358] sm:$0xf]
  %v2670 = vld [vmem:[%s1 + $0x235c] sm:$0xf]
  %v2671 = vld [vmem:[%s1 + $0x2360] sm:$0xf]
  %v2672 = vld [vmem:[%s1 + $0x2364] sm:$0xf]
  %v2673 = vld [vmem:[%s1 + $0x2368] sm:$0xf]
  %v2674 = vld [vmem:[%s1 + $0x236c] sm:$0xf]
  %v2675 = vld [vmem:[%s1 + $0x2370] sm:$0xf]
  %v2676 = vld [vmem:[%s1 + $0x2374] sm:$0xf]
  %v2677 = vld [vmem:[%s1 + $0x2378] sm:$0xf]
  %v2678 = vld [vmem:[%s1 + $0x237c] sm:$0xf]
  %v2679 = vld [vmem:[%s1 + $0x2380] sm:$0xf]
  %v2680 = vld [vmem:[%s1 + $0x2384] sm:$0xf]
  %v2681 = vld [vmem:[%s1 + $0x2388] sm:$0xf]
  %v2682 = vld [vmem:[%s1 + $0x238c] sm:$0xf]
  %v2683 = vld [vmem:[%s1 + $0x2390] sm:$0xf]
  %v2684 = vld [vmem:[%s1 + $0x2394] sm:$0xf]
  %v2685 = vld [vmem:[%s1 + $0x2398] sm:$0xf]
  %v2686 = vld [vmem:[%s1 + $0x239c] sm:$0xf]
  %v2687 = vld [vmem:[%s1 + $0x23a0] sm:$0xf]
  %v2688 = vld [vmem:[%s1 + $0x23a4] sm:$0xf]
  %v2689 = vld [vmem:[%s1 + $0x23a8] sm:$0xf]
  %v2690 = vld [vmem:[%s1 + $0x23ac] sm:$0xf]
  %v2691 = vld [vmem:[%s1 + $0x23b0] sm:$0xf]
  %v2692 = vld [vmem:[%s1 + $0x23b4] sm:$0xf]
  %v2693 = vld [vmem:[%s1 + $0x23b8] sm:$0xf]
  %v2694 = vld [vmem:[%s1 + $0x23bc] sm:$0xf]
  %v2695 = vld [vmem:[%s1 + $0x23c0] sm:$0xf]
  %v2696 = vld [vmem:[%s1 + $0x23c4] sm:$0xf]
  %v2697 = vld [vmem:[%s1 + $0x23c8] sm:$0xf]
  %v2698 = vld [vmem:[%s1 + $0x23cc] sm:$0xf]
  %v2699 = vld [vmem:[%s1 + $0x23d0] sm:$0xf]
  %v2700 = vld [vmem:[%s1 + $0x23d4] sm:$0xf]
  %v2701 = vld [vmem:[%s1 + $0x23d8] sm:$0xf]
  %v2702 = vld [vmem:[%s1 + $0x23dc] sm:$0xf]
  %v2703 = vld [vmem:[%s1 + $0x23e0] sm:$0xf]
  %v2704 = vld [vmem:[%s1 + $0x23e4] sm:$0xf]
  %v2705 = vld [vmem:[%s1 + $0x23e8] sm:$0xf]
  %v2706 = vld [vmem:[%s1 + $0x23ec] sm:$0xf]
  %v2707 = vld [vmem:[%s1 + $0x23f0] sm:$0xf]
  %v2708 = vld [vmem:[%s1 + $0x23f4] sm:$0xf]
  %v2709 = vld [vmem:[%s1 + $0x23f8] sm:$0xf]
  %v2710 = vld [vmem:[%s1 + $0x23fc] sm:$0xf]
  %v2711 = vld [vmem:[%s1 + $0x2400] sm:$0xf]
  %v2712 = vld [vmem:[%s1 + $0x2404] sm:$0xf]
  %v2713 = vld [vmem:[%s1 + $0x2408] sm:$0xf]
  %v2714 = vld [vmem:[%s1 + $0x240c] sm:$0xf]
  %v2715 = vld [vmem:[%s1 + $0x2410] sm:$0xf]
  %v2716 = vld [vmem:[%s1 + $0x2414] sm:$0xf]
  %v2717 = vld [vmem:[%s1 + $0x2418] sm:$0xf]
  %v2718 = vld [vmem:[%s1 + $0x241c] sm:$0xf]
  %v2719 = vld [vmem:[%s1 + $0x2420] sm:$0xf]
  %v2720 = vld [vmem:[%s1 + $0x2424] sm:$0xf]
  %v2721 = vld [vmem:[%s1 + $0x2428] sm:$0xf]
  %v2722 = vld [vmem:[%s1 + $0x242c] sm:$0xf]
  %v2723 = vld [vmem:[%s1 + $0x2430] sm:$0xf]
  %v2724 = vld [vmem:[%s1 + $0x2434] sm:$0xf]
  %v2725 = vld [vmem:[%s1 + $0x2438] sm:$0xf]
  %v2726 = vld [vmem:[%s1 + $0x243c] sm:$0xf]
  %v2727 = vld [vmem:[%s1 + $0x2440] sm:$0xf]
  %v2728 = vld [vmem:[%s1 + $0x2444] sm:$0xf]
  %v2729 = vld [vmem:[%s1 + $0x2448] sm:$0xf]
  %v2730 = vld [vmem:[%s1 + $0x244c] sm:$0xf]
  %v2731 = vld [vmem:[%s1 + $0x2450] sm:$0xf]
  %v2732 = vld [vmem:[%s1 + $0x2454] sm:$0xf]
  %v2733 = vld [vmem:[%s1 + $0x2458] sm:$0xf]
  %v2734 = vld [vmem:[%s1 + $0x245c] sm:$0xf]
  %v2735 = vld [vmem:[%s1 + $0x2460] sm:$0xf]
  %v2736 = vld [vmem:[%s1 + $0x2464] sm:$0xf]
  %v2737 = vld [vmem:[%s1 + $0x2468] sm:$0xf]
  %v2738 = vld [vmem:[%s1 + $0x246c] sm:$0xf]
  %v2739 = vld [vmem:[%s1 + $0x2470] sm:$0xf]
  %v2740 = vld [vmem:[%s1 + $0x2474] sm:$0xf]
  %v2741 = vld [vmem:[%s1 + $0x2478] sm:$0xf]
  %v2742 = vld [vmem:[%s1 + $0x247c] sm:$0xf]
  %v2743 = vld [vmem:[%s1 + $0x2480] sm:$0xf]
  %v2744 = vld [vmem:[%s1 + $0x2484] sm:$0xf]
  %v2745 = vld [vmem:[%s1 + $0x2488] sm:$0xf]
  %v2746 = vld [vmem:[%s1 + $0x248c] sm:$0xf]
  %v2747 = vld [vmem:[%s1 + $0x2490] sm:$0xf]
  %v2748 = vld [vmem:[%s1 + $0x2494] sm:$0xf]
  %v2749 = vld [vmem:[%s1 + $0x2498] sm:$0xf]
  %v2750 = vld [vmem:[%s1 + $0x249c] sm:$0xf]
  %v2751 = vld [vmem:[%s1 + $0x24a0] sm:$0xf]
  %v2752 = vld [vmem:[%s1 + $0x24a4] sm:$0xf]
  %v2753 = vld [vmem:[%s1 + $0x24a8] sm:$0xf]
  %v2754 = vld [vmem:[%s1 + $0x24ac] sm:$0xf]
  %v2755 = vld [vmem:[%s1 + $0x24b0] sm:$0xf]
  %v2756 = vld [vmem:[%s1 + $0x24b4] sm:$0xf]
  %v2757 = vld [vmem:[%s1 + $0x24b8] sm:$0xf]
  %v2758 = vld [vmem:[%s1 + $0x24bc] sm:$0xf]
  %v2759 = vld [vmem:[%s1 + $0x24c0] sm:$0xf]
  %v2760 = vld [vmem:[%s1 + $0x24c4] sm:$0xf]
  %v2761 = vld [vmem:[%s1 + $0x24c8] sm:$0xf]
  %v2762 = vld [vmem:[%s1 + $0x24cc] sm:$0xf]
  %v2763 = vld [vmem:[%s1 + $0x24d0] sm:$0xf]
  %v2764 = vld [vmem:[%s1 + $0x24d4] sm:$0xf]
  %v2765 = vld [vmem:[%s1 + $0x24d8] sm:$0xf]
  %v2766 = vld [vmem:[%s1 + $0x24dc] sm:$0xf]
  %v2767 = vld [vmem:[%s1 + $0x24e0] sm:$0xf]
  %v2768 = vld [vmem:[%s1 + $0x24e4] sm:$0xf]
  %v2769 = vld [vmem:[%s1 + $0x24e8] sm:$0xf]
  %v2770 = vld [vmem:[%s1 + $0x24ec] sm:$0xf]
  %v2771 = vld [vmem:[%s1 + $0x24f0] sm:$0xf]
  %v2772 = vld [vmem:[%s1 + $0x24f4] sm:$0xf]
  %v2773 = vld [vmem:[%s1 + $0x24f8] sm:$0xf]
  %v2774 = vld [vmem:[%s1 + $0x24fc] sm:$0xf]
  %v2775 = vld [vmem:[%s1 + $0x2500] sm:$0xf]
  %v2776 = vld [vmem:[%s1 + $0x2504] sm:$0xf]
  %v2777 = vld [vmem:[%s1 + $0x2508] sm:$0xf]
  %v2778 = vld [vmem:[%s1 + $0x250c] sm:$0xf]
  %v2779 = vld [vmem:[%s1 + $0x2510] sm:$0xf]
  %v2780 = vld [vmem:[%s1 + $0x2514] sm:$0xf]
  %v2781 = vld [vmem:[%s1 + $0x2518] sm:$0xf]
  %v2782 = vld [vmem:[%s1 + $0x251c] sm:$0xf]
  %v2783 = vld [vmem:[%s1 + $0x2520] sm:$0xf]
  %v2784 = vld [vmem:[%s1 + $0x2524] sm:$0xf]
  %v2785 = vld [vmem:[%s1 + $0x2528] sm:$0xf]
  %v2786 = vld [vmem:[%s1 + $0x252c] sm:$0xf]
  %v2787 = vld [vmem:[%s1 + $0x2530] sm:$0xf]
  %v2788 = vld [vmem:[%s1 + $0x2534] sm:$0xf]
  %v2789 = vld [vmem:[%s1 + $0x2538] sm:$0xf]
  %v2790 = vld [vmem:[%s1 + $0x253c] sm:$0xf]
  %v2791 = vld [vmem:[%s1 + $0x2540] sm:$0xf]
  %v2792 = vld [vmem:[%s1 + $0x2544] sm:$0xf]
  %v2793 = vld [vmem:[%s1 + $0x2548] sm:$0xf]
  %v2794 = vld [vmem:[%s1 + $0x254c] sm:$0xf]
  %v2795 = vld [vmem:[%s1 + $0x2550] sm:$0xf]
  %v2796 = vld [vmem:[%s1 + $0x2554] sm:$0xf]
  %v2797 = vld [vmem:[%s1 + $0x2558] sm:$0xf]
  %v2798 = vld [vmem:[%s1 + $0x255c] sm:$0xf]
  %v2799 = vld [vmem:[%s1 + $0x2560] sm:$0xf]
  %v2800 = vld [vmem:[%s1 + $0x2564] sm:$0xf]
  %v2801 = vld [vmem:[%s1 + $0x2568] sm:$0xf]
  %v2802 = vld [vmem:[%s1 + $0x256c] sm:$0xf]
  %v2803 = vld [vmem:[%s1 + $0x2570] sm:$0xf]
  %v2804 = vld [vmem:[%s1 + $0x2574] sm:$0xf]
  %v2805 = vld [vmem:[%s1 + $0x2578] sm:$0xf]
  %v2806 = vld [vmem:[%s1 + $0x257c] sm:$0xf]
  %v2807 = vld [vmem:[%s1 + $0x2580] sm:$0xf]
  %v2808 = vld [vmem:[%s1 + $0x2584] sm:$0xf]
  %v2809 = vld [vmem:[%s1 + $0x2588] sm:$0xf]
  %v2810 = vld [vmem:[%s1 + $0x258c] sm:$0xf]
  %v2811 = vld [vmem:[%s1 + $0x2590] sm:$0xf]
  %v2812 = vld [vmem:[%s1 + $0x2594] sm:$0xf]
  %v2813 = vld [vmem:[%s1 + $0x2598] sm:$0xf]
  %v2814 = vld [vmem:[%s1 + $0x259c] sm:$0xf]
  %v2815 = vld [vmem:[%s1 + $0x25a0] sm:$0xf]
  %v2816 = vld [vmem:[%s1 + $0x25a4] sm:$0xf]
  %v2817 = vld [vmem:[%s1 + $0x25a8] sm:$0xf]
  %v2818 = vld [vmem:[%s1 + $0x25ac] sm:$0xf]
  %v2819 = vld [vmem:[%s1 + $0x25b0] sm:$0xf]
  %v2820 = vld [vmem:[%s1 + $0x25b4] sm:$0xf]
  %v2821 = vld [vmem:[%s1 + $0x25b8] sm:$0xf]
  %v2822 = vld [vmem:[%s1 + $0x25bc] sm:$0xf]
  %v2823 = vld [vmem:[%s1 + $0x25c0] sm:$0xf]
  %v2824 = vld [vmem:[%s1 + $0x25c4] sm:$0xf]
  %v2825 = vld [vmem:[%s1 + $0x25c8] sm:$0xf]
  %v2826 = vld [vmem:[%s1 + $0x25cc] sm:$0xf]
  %v2827 = vld [vmem:[%s1 + $0x25d0] sm:$0xf]
  %v2828 = vld [vmem:[%s1 + $0x25d4] sm:$0xf]
  %v2829 = vld [vmem:[%s1 + $0x25d8] sm:$0xf]
  %v2830 = vld [vmem:[%s1 + $0x25dc] sm:$0xf]
  %v2831 = vld [vmem:[%s1 + $0x25e0] sm:$0xf]
  %v2832 = vld [vmem:[%s1 + $0x25e4] sm:$0xf]
  %v2833 = vld [vmem:[%s1 + $0x25e8] sm:$0xf]
  %v2834 = vld [vmem:[%s1 + $0x25ec] sm:$0xf]
  %v2835 = vld [vmem:[%s1 + $0x25f0] sm:$0xf]
  %v2836 = vld [vmem:[%s1 + $0x25f4] sm:$0xf]
  %v2837 = vld [vmem:[%s1 + $0x25f8] sm:$0xf]
  %v2838 = vld [vmem:[%s1 + $0x25fc] sm:$0xf]
  %v2839 = vld [vmem:[%s1 + $0x2600] sm:$0xf]
  %v2840 = vld [vmem:[%s1 + $0x2604] sm:$0xf]
  %v2841 = vld [vmem:[%s1 + $0x2608] sm:$0xf]
  %v2842 = vld [vmem:[%s1 + $0x260c] sm:$0xf]
  %v2843 = vld [vmem:[%s1 + $0x2610] sm:$0xf]
  %v2844 = vld [vmem:[%s1 + $0x2614] sm:$0xf]
  %v2845 = vld [vmem:[%s1 + $0x2618] sm:$0xf]
  %v2846 = vld [vmem:[%s1 + $0x261c] sm:$0xf]
  %v2847 = vld [vmem:[%s1 + $0x2620] sm:$0xf]
  %v2848 = vld [vmem:[%s1 + $0x2624] sm:$0xf]
  %v2849 = vld [vmem:[%s1 + $0x2628] sm:$0xf]
  %v2850 = vld [vmem:[%s1 + $0x262c] sm:$0xf]
  %v2851 = vld [vmem:[%s1 + $0x2630] sm:$0xf]
  %v2852 = vld [vmem:[%s1 + $0x2634] sm:$0xf]
  %v2853 = vld [vmem:[%s1 + $0x2638] sm:$0xf]
  %v2854 = vld [vmem:[%s1 + $0x263c] sm:$0xf]
  %v2855 = vld [vmem:[%s1 + $0x2640] sm:$0xf]
  %v2856 = vld [vmem:[%s1 + $0x2644] sm:$0xf]
  %v2857 = vld [vmem:[%s1 + $0x2648] sm:$0xf]
  %v2858 = vld [vmem:[%s1 + $0x264c] sm:$0xf]
  %v2859 = vld [vmem:[%s1 + $0x2650] sm:$0xf]
  %v2860 = vld [vmem:[%s1 + $0x2654] sm:$0xf]
  %v2861 = vld [vmem:[%s1 + $0x2658] sm:$0xf]
  %v2862 = vld [vmem:[%s1 + $0x265c] sm:$0xf]
  %v2863 = vld [vmem:[%s1 + $0x2660] sm:$0xf]
  %v2864 = vld [vmem:[%s1 + $0x2664] sm:$0xf]
  %v2865 = vld [vmem:[%s1 + $0x2668] sm:$0xf]
  %v2866 = vld [vmem:[%s1 + $0x266c] sm:$0xf]
  %v2867 = vld [vmem:[%s1 + $0x2670] sm:$0xf]
  %v2868 = vld [vmem:[%s1 + $0x2674] sm:$0xf]
  %v2869 = vld [vmem:[%s1 + $0x2678] sm:$0xf]
  %v2870 = vld [vmem:[%s1 + $0x267c] sm:$0xf]
  %v2871 = vld [vmem:[%s1 + $0x2680] sm:$0xf]
  %v2872 = vld [vmem:[%s1 + $0x2684] sm:$0xf]
  %v2873 = vld [vmem:[%s1 + $0x2688] sm:$0xf]
  %v2874 = vld [vmem:[%s1 + $0x268c] sm:$0xf]
  %v2875 = vld [vmem:[%s1 + $0x2690] sm:$0xf]
  %v2876 = vld [vmem:[%s1 + $0x2694] sm:$0xf]
  %v2877 = vld [vmem:[%s1 + $0x2698] sm:$0xf]
  %v2878 = vld [vmem:[%s1 + $0x269c] sm:$0xf]
  %v2879 = vld [vmem:[%s1 + $0x26a0] sm:$0xf]
  %v2880 = vld [vmem:[%s1 + $0x26a4] sm:$0xf]
  %v2881 = vld [vmem:[%s1 + $0x26a8] sm:$0xf]
  %v2882 = vld [vmem:[%s1 + $0x26ac] sm:$0xf]
  %v2883 = vld [vmem:[%s1 + $0x26b0] sm:$0xf]
  %v2884 = vld [vmem:[%s1 + $0x26b4] sm:$0xf]
  %v2885 = vld [vmem:[%s1 + $0x26b8] sm:$0xf]
  %v2886 = vld [vmem:[%s1 + $0x26bc] sm:$0xf]
  %v2887 = vld [vmem:[%s1 + $0x26c0] sm:$0xf]
  %v2888 = vld [vmem:[%s1 + $0x26c4] sm:$0xf]
  %v2889 = vld [vmem:[%s1 + $0x26c8] sm:$0xf]
  %v2890 = vld [vmem:[%s1 + $0x26cc] sm:$0xf]
  %v2891 = vld [vmem:[%s1 + $0x26d0] sm:$0xf]
  %v2892 = vld [vmem:[%s1 + $0x26d4] sm:$0xf]
  %v2893 = vld [vmem:[%s1 + $0x26d8] sm:$0xf]
  %v2894 = vld [vmem:[%s1 + $0x26dc] sm:$0xf]
  %v2895 = vld [vmem:[%s1 + $0x26e0] sm:$0xf]
  %v2896 = vld [vmem:[%s1 + $0x26e4] sm:$0xf]
  %v2897 = vld [vmem:[%s1 + $0x26e8] sm:$0xf]
  %v2898 = vld [vmem:[%s1 + $0x26ec] sm:$0xf]
  %v2899 = vld [vmem:[%s1 + $0x26f0] sm:$0xf]
  %v2900 = vld [vmem:[%s1 + $0x26f4] sm:$0xf]
  %v2901 = vld [vmem:[%s1 + $0x26f8] sm:$0xf]
  %v2902 = vld [vmem:[%s1 + $0x26fc] sm:$0xf]
  %v2903 = vld [vmem:[%s1 + $0x2700] sm:$0xf]
  %v2904 = vld [vmem:[%s1 + $0x2704] sm:$0xf]
  %v2905 = vld [vmem:[%s1 + $0x2708] sm:$0xf]
  %v2906 = vld [vmem:[%s1 + $0x270c] sm:$0xf]
  %v2907 = vld [vmem:[%s1 + $0x2710] sm:$0xf]
  %v2908 = vld [vmem:[%s1 + $0x2714] sm:$0xf]
  %v2909 = vld [vmem:[%s1 + $0x2718] sm:$0xf]
  %v2910 = vld [vmem:[%s1 + $0x271c] sm:$0xf]
  %v2911 = vld [vmem:[%s1 + $0x2720] sm:$0xf]
  %v2912 = vld [vmem:[%s1 + $0x2724] sm:$0xf]
  %v2913 = vld [vmem:[%s1 + $0x2728] sm:$0xf]
  %v2914 = vld [vmem:[%s1 + $0x272c] sm:$0xf]
  %v2915 = vld [vmem:[%s1 + $0x2730] sm:$0xf]
  %v2916 = vld [vmem:[%s1 + $0x2734] sm:$0xf]
  %v2917 = vld [vmem:[%s1 + $0x2738] sm:$0xf]
  %v2918 = vld [vmem:[%s1 + $0x273c] sm:$0xf]
  %v2919 = vld [vmem:[%s1 + $0x2740] sm:$0xf]
  %v2920 = vld [vmem:[%s1 + $0x2744] sm:$0xf]
  %v2921 = vld [vmem:[%s1 + $0x2748] sm:$0xf]
  %v2922 = vld [vmem:[%s1 + $0x274c] sm:$0xf]
  %v2923 = vld [vmem:[%s1 + $0x2750] sm:$0xf]
  %v2924 = vld [vmem:[%s1 + $0x2754] sm:$0xf]
  %v2925 = vld [vmem:[%s1 + $0x2758] sm:$0xf]
  %v2926 = vld [vmem:[%s1 + $0x275c] sm:$0xf]
  %v2927 = vld [vmem:[%s1 + $0x2760] sm:$0xf]
  %v2928 = vld [vmem:[%s1 + $0x2764] sm:$0xf]
  %v2929 = vld [vmem:[%s1 + $0x2768] sm:$0xf]
  %v2930 = vld [vmem:[%s1 + $0x276c] sm:$0xf]
  %v2931 = vld [vmem:[%s1 + $0x2770] sm:$0xf]
  %v2932 = vld [vmem:[%s1 + $0x2774] sm:$0xf]
  %v2933 = vld [vmem:[%s1 + $0x2778] sm:$0xf]
  %v2934 = vld [vmem:[%s1 + $0x277c] sm:$0xf]
  %v2935 = vld [vmem:[%s1 + $0x2780] sm:$0xf]
  %v2936 = vld [vmem:[%s1 + $0x2784] sm:$0xf]
  %v2937 = vld [vmem:[%s1 + $0x2788] sm:$0xf]
  %v2938 = vld [vmem:[%s1 + $0x278c] sm:$0xf]
  %v2939 = vld [vmem:[%s1 + $0x2790] sm:$0xf]
  %v2940 = vld [vmem:[%s1 + $0x2794] sm:$0xf]
  %v2941 = vld [vmem:[%s1 + $0x2798] sm:$0xf]
  %v2942 = vld [vmem:[%s1 + $0x279c] sm:$0xf]
  %v2943 = vld [vmem:[%s1 + $0x27a0] sm:$0xf]
  %v2944 = vld [vmem:[%s1 + $0x27a4] sm:$0xf]
  %v2945 = vld [vmem:[%s1 + $0x27a8] sm:$0xf]
  %v2946 = vld [vmem:[%s1 + $0x27ac] sm:$0xf]
  %v2947 = vld [vmem:[%s1 + $0x27b0] sm:$0xf]
  %v2948 = vld [vmem:[%s1 + $0x27b4] sm:$0xf]
  %v2949 = vld [vmem:[%s1 + $0x27b8] sm:$0xf]
  %v2950 = vld [vmem:[%s1 + $0x27bc] sm:$0xf]
  %v2951 = vld [vmem:[%s1 + $0x27c0] sm:$0xf]
  %v2952 = vld [vmem:[%s1 + $0x27c4] sm:$0xf]
  %v2953 = vld [vmem:[%s1 + $0x27c8] sm:$0xf]
  %v2954 = vld [vmem:[%s1 + $0x27cc] sm:$0xf]
  %v2955 = vld [vmem:[%s1 + $0x27d0] sm:$0xf]
  %v2956 = vld [vmem:[%s1 + $0x27d4] sm:$0xf]
  %v2957 = vld [vmem:[%s1 + $0x27d8] sm:$0xf]
  %v2958 = vld [vmem:[%s1 + $0x27dc] sm:$0xf]
  %v2959 = vld [vmem:[%s1 + $0x27e0] sm:$0xf]
  %v2960 = vld [vmem:[%s1 + $0x27e4] sm:$0xf]
  %v2961 = vld [vmem:[%s1 + $0x27e8] sm:$0xf]
  %v2962 = vld [vmem:[%s1 + $0x27ec] sm:$0xf]
  %v2963 = vld [vmem:[%s1 + $0x27f0] sm:$0xf]
  %v2964 = vld [vmem:[%s1 + $0x27f4] sm:$0xf]
  %v2965 = vld [vmem:[%s1 + $0x27f8] sm:$0xf]
  %v2966 = vld [vmem:[%s1 + $0x27fc] sm:$0xf]
  %v2967 = vld [vmem:[%s1 + $0x2800] sm:$0xf]
  %v2968 = vld [vmem:[%s1 + $0x2804] sm:$0xf]
  %v2969 = vld [vmem:[%s1 + $0x2808] sm:$0xf]
  %v2970 = vld [vmem:[%s1 + $0x280c] sm:$0xf]
  %v2971 = vld [vmem:[%s1 + $0x2810] sm:$0xf]
  %v2972 = vld [vmem:[%s1 + $0x2814] sm:$0xf]
  %v2973 = vld [vmem:[%s1 + $0x2818] sm:$0xf]
  %v2974 = vld [vmem:[%s1 + $0x281c] sm:$0xf]
  %v2975 = vld [vmem:[%s1 + $0x2820] sm:$0xf]
  %v2976 = vld [vmem:[%s1 + $0x2824] sm:$0xf]
  %v2977 = vld [vmem:[%s1 + $0x2828] sm:$0xf]
  %v2978 = vld [vmem:[%s1 + $0x282c] sm:$0xf]
  %v2979 = vld [vmem:[%s1 + $0x2830] sm:$0xf]
  %v2980 = vld [vmem:[%s1 + $0x2834] sm:$0xf]
  %v2981 = vld [vmem:[%s1 + $0x2838] sm:$0xf]
  %v2982 = vld [vmem:[%s1 + $0x283c] sm:$0xf]
  %v2983 = vld [vmem:[%s1 + $0x2840] sm:$0xf]
  %v2984 = vld [vmem:[%s1 + $0x2844] sm:$0xf]
  %v2985 = vld [vmem:[%s1 + $0x2848] sm:$0xf]
  %v2986 = vld [vmem:[%s1 + $0x284c] sm:$0xf]
  %v2987 = vld [vmem:[%s1 + $0x2850] sm:$0xf]
  %v2988 = vld [vmem:[%s1 + $0x2854] sm:$0xf]
  %v2989 = vld [vmem:[%s1 + $0x2858] sm:$0xf]
  %v2990 = vld [vmem:[%s1 + $0x285c] sm:$0xf]
  %v2991 = vld [vmem:[%s1 + $0x2860] sm:$0xf]
  %v2992 = vld [vmem:[%s1 + $0x2864] sm:$0xf]
  %v2993 = vld [vmem:[%s1 + $0x2868] sm:$0xf]
  %v2994 = vld [vmem:[%s1 + $0x286c] sm:$0xf]
  %v2995 = vld [vmem:[%s1 + $0x2870] sm:$0xf]
  %v2996 = vld [vmem:[%s1 + $0x2874] sm:$0xf]
  %v2997 = vld [vmem:[%s1 + $0x2878] sm:$0xf]
  %v2998 = vld [vmem:[%s1 + $0x287c] sm:$0xf]
  %v2999 = vld [vmem:[%s1 + $0x2880] sm:$0xf]
  %v3000 = vld [vmem:[%s1 + $0x2884] sm:$0xf]
  %v3001 = vld [vmem:[%s1 + $0x2888] sm:$0xf]
  %v3002 = vld [vmem:[%s1 + $0x288c] sm:$0xf]
  %v3003 = vld [vmem:[%s1 + $0x2890] sm:$0xf]
  %v3004 = vld [vmem:[%s1 + $0x2894] sm:$0xf]
  %v3005 = vld [vmem:[%s1 + $0x2898] sm:$0xf]
  %v3006 = vld [vmem:[%s1 + $0x289c] sm:$0xf]
  %v3007 = vld [vmem:[%s1 + $0x28a0] sm:$0xf]
  %v3008 = vld [vmem:[%s1 + $0x28a4] sm:$0xf]
  %v3009 = vld [vmem:[%s1 + $0x28a8] sm:$0xf]
  %v3010 = vld [vmem:[%s1 + $0x28ac] sm:$0xf]
  %v3011 = vld [vmem:[%s1 + $0x28b0] sm:$0xf]
  %v3012 = vld [vmem:[%s1 + $0x28b4] sm:$0xf]
  %v3013 = vld [vmem:[%s1 + $0x28b8] sm:$0xf]
  %v3014 = vld [vmem:[%s1 + $0x28bc] sm:$0xf]
  %v3015 = vld [vmem:[%s1 + $0x28c0] sm:$0xf]
  %v3016 = vld [vmem:[%s1 + $0x28c4] sm:$0xf]
  %v3017 = vld [vmem:[%s1 + $0x28c8] sm:$0xf]
  %v3018 = vld [vmem:[%s1 + $0x28cc] sm:$0xf]
  %v3019 = vld [vmem:[%s1 + $0x28d0] sm:$0xf]
  %v3020 = vld [vmem:[%s1 + $0x28d4] sm:$0xf]
  %v3021 = vld [vmem:[%s1 + $0x28d8] sm:$0xf]
  %v3022 = vld [vmem:[%s1 + $0x28dc] sm:$0xf]
  %v3023 = vld [vmem:[%s1 + $0x28e0] sm:$0xf]
  %v3024 = vld [vmem:[%s1 + $0x28e4] sm:$0xf]
  %v3025 = vld [vmem:[%s1 + $0x28e8] sm:$0xf]
  %v3026 = vld [vmem:[%s1 + $0x28ec] sm:$0xf]
  %v3027 = vld [vmem:[%s1 + $0x28f0] sm:$0xf]
  %v3028 = vld [vmem:[%s1 + $0x28f4] sm:$0xf]
  %v3029 = vld [vmem:[%s1 + $0x28f8] sm:$0xf]
  %v3030 = vld [vmem:[%s1 + $0x28fc] sm:$0xf]
  %v3031 = vld [vmem:[%s1 + $0x2900] sm:$0xf]
  %v3032 = vld [vmem:[%s1 + $0x2904] sm:$0xf]
  %v3033 = vld [vmem:[%s1 + $0x2908] sm:$0xf]
  %v3034 = vld [vmem:[%s1 + $0x290c] sm:$0xf]
  %v3035 = vld [vmem:[%s1 + $0x2910] sm:$0xf]
  %v3036 = vld [vmem:[%s1 + $0x2914] sm:$0xf]
  %v3037 = vld [vmem:[%s1 + $0x2918] sm:$0xf]
  %v3038 = vld [vmem:[%s1 + $0x291c] sm:$0xf]
  %v3039 = vld [vmem:[%s1 + $0x2920] sm:$0xf]
  %v3040 = vld [vmem:[%s1 + $0x2924] sm:$0xf]
  %v3041 = vld [vmem:[%s1 + $0x2928] sm:$0xf]
  %v3042 = vld [vmem:[%s1 + $0x292c] sm:$0xf]
  %v3043 = vld [vmem:[%s1 + $0x2930] sm:$0xf]
  %v3044 = vld [vmem:[%s1 + $0x2934] sm:$0xf]
  %v3045 = vld [vmem:[%s1 + $0x2938] sm:$0xf]
  %v3046 = vld [vmem:[%s1 + $0x293c] sm:$0xf]
  %v3047 = vld [vmem:[%s1 + $0x2940] sm:$0xf]
  %v3048 = vld [vmem:[%s1 + $0x2944] sm:$0xf]
  %v3049 = vld [vmem:[%s1 + $0x2948] sm:$0xf]
  %v3050 = vld [vmem:[%s1 + $0x294c] sm:$0xf]
  %v3051 = vld [vmem:[%s1 + $0x2950] sm:$0xf]
  %v3052 = vld [vmem:[%s1 + $0x2954] sm:$0xf]
  %v3053 = vld [vmem:[%s1 + $0x2958] sm:$0xf]
  %v3054 = vld [vmem:[%s1 + $0x295c] sm:$0xf]
  %v3055 = vld [vmem:[%s1 + $0x2960] sm:$0xf]
  %v3056 = vld [vmem:[%s1 + $0x2964] sm:$0xf]
  %v3057 = vld [vmem:[%s1 + $0x2968] sm:$0xf]
  %v3058 = vld [vmem:[%s1 + $0x296c] sm:$0xf]
  %v3059 = vld [vmem:[%s1 + $0x2970] sm:$0xf]
  %v3060 = vld [vmem:[%s1 + $0x2974] sm:$0xf]
  %v3061 = vld [vmem:[%s1 + $0x2978] sm:$0xf]
  %v3062 = vld [vmem:[%s1 + $0x297c] sm:$0xf]
  %v3063 = vld [vmem:[%s1 + $0x2980] sm:$0xf]
  %v3064 = vld [vmem:[%s1 + $0x2984] sm:$0xf]
  %v3065 = vld [vmem:[%s1 + $0x2988] sm:$0xf]
  %v3066 = vld [vmem:[%s1 + $0x298c] sm:$0xf]
  %v3067 = vld [vmem:[%s1 + $0x2990] sm:$0xf]
  %v3068 = vld [vmem:[%s1 + $0x2994] sm:$0xf]
  %v3069 = vld [vmem:[%s1 + $0x2998] sm:$0xf]
  %v3070 = vld [vmem:[%s1 + $0x299c] sm:$0xf]
  %v3071 = vld [vmem:[%s1 + $0x29a0] sm:$0xf]
  %v3072 = vld [vmem:[%s1 + $0x29a4] sm:$0xf]
  %v3073 = vld [vmem:[%s1 + $0x29a8] sm:$0xf]
  %v3074 = vld [vmem:[%s1 + $0x29ac] sm:$0xf]
  %v3075 = vld [vmem:[%s1 + $0x29b0] sm:$0xf]
  %v3076 = vld [vmem:[%s1 + $0x29b4] sm:$0xf]
  %v3077 = vld [vmem:[%s1 + $0x29b8] sm:$0xf]
  %v3078 = vld [vmem:[%s1 + $0x29bc] sm:$0xf]
  %v3079 = vld [vmem:[%s1 + $0x29c0] sm:$0xf]
  %v3080 = vld [vmem:[%s1 + $0x29c4] sm:$0xf]
  %v3081 = vld [vmem:[%s1 + $0x29c8] sm:$0xf]
  %v3082 = vld [vmem:[%s1 + $0x29cc] sm:$0xf]
  %v3083 = vld [vmem:[%s1 + $0x29d0] sm:$0xf]
  %v3084 = vld [vmem:[%s1 + $0x29d4] sm:$0xf]
  %v3085 = vld [vmem:[%s1 + $0x29d8] sm:$0xf]
  %v3086 = vld [vmem:[%s1 + $0x29dc] sm:$0xf]
  %v3087 = vld [vmem:[%s1 + $0x29e0] sm:$0xf]
  %v3088 = vld [vmem:[%s1 + $0x29e4] sm:$0xf]
  %v3089 = vld [vmem:[%s1 + $0x29e8] sm:$0xf]
  %v3090 = vld [vmem:[%s1 + $0x29ec] sm:$0xf]
  %v3091 = vld [vmem:[%s1 + $0x29f0] sm:$0xf]
  %v3092 = vld [vmem:[%s1 + $0x29f4] sm:$0xf]
  %v3093 = vld [vmem:[%s1 + $0x29f8] sm:$0xf]
  %v3094 = vld [vmem:[%s1 + $0x29fc] sm:$0xf]
  %v3095 = vld [vmem:[%s1 + $0x2a00] sm:$0xf]
  %v3096 = vld [vmem:[%s1 + $0x2a04] sm:$0xf]
  %v3097 = vld [vmem:[%s1 + $0x2a08] sm:$0xf]
  %v3098 = vld [vmem:[%s1 + $0x2a0c] sm:$0xf]
  %v3099 = vld [vmem:[%s1 + $0x2a10] sm:$0xf]
  %v3100 = vld [vmem:[%s1 + $0x2a14] sm:$0xf]
  %v3101 = vld [vmem:[%s1 + $0x2a18] sm:$0xf]
  %v3102 = vld [vmem:[%s1 + $0x2a1c] sm:$0xf]
  %v3103 = vld [vmem:[%s1 + $0x2a20] sm:$0xf]
  %v3104 = vld [vmem:[%s1 + $0x2a24] sm:$0xf]
  %v3105 = vld [vmem:[%s1 + $0x2a28] sm:$0xf]
  %v3106 = vld [vmem:[%s1 + $0x2a2c] sm:$0xf]
  %v3107 = vld [vmem:[%s1 + $0x2a30] sm:$0xf]
  %v3108 = vld [vmem:[%s1 + $0x2a34] sm:$0xf]
  %v3109 = vld [vmem:[%s1 + $0x2a38] sm:$0xf]
  %v3110 = vld [vmem:[%s1 + $0x2a3c] sm:$0xf]
  %v3111 = vld [vmem:[%s1 + $0x2a40] sm:$0xf]
  %v3112 = vld [vmem:[%s1 + $0x2a44] sm:$0xf]
  %v3113 = vld [vmem:[%s1 + $0x2a48] sm:$0xf]
  %v3114 = vld [vmem:[%s1 + $0x2a4c] sm:$0xf]
  %v3115 = vld [vmem:[%s1 + $0x2a50] sm:$0xf]
  %v3116 = vld [vmem:[%s1 + $0x2a54] sm:$0xf]
  %v3117 = vld [vmem:[%s1 + $0x2a58] sm:$0xf]
  %v3118 = vld [vmem:[%s1 + $0x2a5c] sm:$0xf]
  %v3119 = vld [vmem:[%s1 + $0x2a60] sm:$0xf]
  %v3120 = vld [vmem:[%s1 + $0x2a64] sm:$0xf]
  %v3121 = vld [vmem:[%s1 + $0x2a68] sm:$0xf]
  %v3122 = vld [vmem:[%s1 + $0x2a6c] sm:$0xf]
  %v3123 = vld [vmem:[%s1 + $0x2a70] sm:$0xf]
  %v3124 = vld [vmem:[%s1 + $0x2a74] sm:$0xf]
  %v3125 = vld [vmem:[%s1 + $0x2a78] sm:$0xf]
  %v3126 = vld [vmem:[%s1 + $0x2a7c] sm:$0xf]
  %v3127 = vld [vmem:[%s1 + $0x2a80] sm:$0xf]
  %v3128 = vld [vmem:[%s1 + $0x2a84] sm:$0xf]
  %v3129 = vld [vmem:[%s1 + $0x2a88] sm:$0xf]
  %v3130 = vld [vmem:[%s1 + $0x2a8c] sm:$0xf]
  %v3131 = vld [vmem:[%s1 + $0x2a90] sm:$0xf]
  %v3132 = vld [vmem:[%s1 + $0x2a94] sm:$0xf]
  %v3133 = vld [vmem:[%s1 + $0x2a98] sm:$0xf]
  %v3134 = vld [vmem:[%s1 + $0x2a9c] sm:$0xf]
  %v3135 = vld [vmem:[%s1 + $0x2aa0] sm:$0xf]
  %v3136 = vld [vmem:[%s1 + $0x2aa4] sm:$0xf]
  %v3137 = vld [vmem:[%s1 + $0x2aa8] sm:$0xf]
  %v3138 = vld [vmem:[%s1 + $0x2aac] sm:$0xf]
  %v3139 = vld [vmem:[%s1 + $0x2ab0] sm:$0xf]
  %v3140 = vld [vmem:[%s1 + $0x2ab4] sm:$0xf]
  %v3141 = vld [vmem:[%s1 + $0x2ab8] sm:$0xf]
  %v3142 = vld [vmem:[%s1 + $0x2abc] sm:$0xf]
  %v3143 = vld [vmem:[%s1 + $0x2ac0] sm:$0xf]
  %v3144 = vld [vmem:[%s1 + $0x2ac4] sm:$0xf]
  %v3145 = vld [vmem:[%s1 + $0x2ac8] sm:$0xf]
  %v3146 = vld [vmem:[%s1 + $0x2acc] sm:$0xf]
  %v3147 = vld [vmem:[%s1 + $0x2ad0] sm:$0xf]
  %v3148 = vld [vmem:[%s1 + $0x2ad4] sm:$0xf]
  %v3149 = vld [vmem:[%s1 + $0x2ad8] sm:$0xf]
  %v3150 = vld [vmem:[%s1 + $0x2adc] sm:$0xf]
  %v3151 = vld [vmem:[%s1 + $0x2ae0] sm:$0xf]
  %v3152 = vld [vmem:[%s1 + $0x2ae4] sm:$0xf]
  %v3153 = vld [vmem:[%s1 + $0x2ae8] sm:$0xf]
  %v3154 = vld [vmem:[%s1 + $0x2aec] sm:$0xf]
  %v3155 = vld [vmem:[%s1 + $0x2af0] sm:$0xf]
  %v3156 = vld [vmem:[%s1 + $0x2af4] sm:$0xf]
  %v3157 = vld [vmem:[%s1 + $0x2af8] sm:$0xf]
  %v3158 = vld [vmem:[%s1 + $0x2afc] sm:$0xf]
  %v3159 = vld [vmem:[%s1 + $0x2b00] sm:$0xf]
  %v3160 = vld [vmem:[%s1 + $0x2b04] sm:$0xf]
  %v3161 = vld [vmem:[%s1 + $0x2b08] sm:$0xf]
  %v3162 = vld [vmem:[%s1 + $0x2b0c] sm:$0xf]
  %v3163 = vld [vmem:[%s1 + $0x2b10] sm:$0xf]
  %v3164 = vld [vmem:[%s1 + $0x2b14] sm:$0xf]
  %v3165 = vld [vmem:[%s1 + $0x2b18] sm:$0xf]
  %v3166 = vld [vmem:[%s1 + $0x2b1c] sm:$0xf]
  %v3167 = vld [vmem:[%s1 + $0x2b20] sm:$0xf]
  %v3168 = vld [vmem:[%s1 + $0x2b24] sm:$0xf]
  %v3169 = vld [vmem:[%s1 + $0x2b28] sm:$0xf]
  %v3170 = vld [vmem:[%s1 + $0x2b2c] sm:$0xf]
  %v3171 = vld [vmem:[%s1 + $0x2b30] sm:$0xf]
  %v3172 = vld [vmem:[%s1 + $0x2b34] sm:$0xf]
  %v3173 = vld [vmem:[%s1 + $0x2b38] sm:$0xf]
  %v3174 = vld [vmem:[%s1 + $0x2b3c] sm:$0xf]
  %v3175 = vld [vmem:[%s1 + $0x2b40] sm:$0xf]
  %v3176 = vld [vmem:[%s1 + $0x2b44] sm:$0xf]
  %v3177 = vld [vmem:[%s1 + $0x2b48] sm:$0xf]
  %v3178 = vld [vmem:[%s1 + $0x2b4c] sm:$0xf]
  %v3179 = vld [vmem:[%s1 + $0x2b50] sm:$0xf]
  %v3180 = vld [vmem:[%s1 + $0x2b54] sm:$0xf]
  %v3181 = vld [vmem:[%s1 + $0x2b58] sm:$0xf]
  %v3182 = vld [vmem:[%s1 + $0x2b5c] sm:$0xf]
  %v3183 = vld [vmem:[%s1 + $0x2b60] sm:$0xf]
  %v3184 = vld [vmem:[%s1 + $0x2b64] sm:$0xf]
  %v3185 = vld [vmem:[%s1 + $0x2b68] sm:$0xf]
  %v3186 = vld [vmem:[%s1 + $0x2b6c] sm:$0xf]
  %v3187 = vld [vmem:[%s1 + $0x2b70] sm:$0xf]
  %v3188 = vld [vmem:[%s1 + $0x2b74] sm:$0xf]
  %v3189 = vld [vmem:[%s1 + $0x2b78] sm:$0xf]
  %v3190 = vld [vmem:[%s1 + $0x2b7c] sm:$0xf]
  %v3191 = vld [vmem:[%s1 + $0x2b80] sm:$0xf]
  %v3192 = vld [vmem:[%s1 + $0x2b84] sm:$0xf]
  %v3193 = vld [vmem:[%s1 + $0x2b88] sm:$0xf]
  %v3194 = vld [vmem:[%s1 + $0x2b8c] sm:$0xf]
  %v3195 = vld [vmem:[%s1 + $0x2b90] sm:$0xf]
  %v3196 = vld [vmem:[%s1 + $0x2b94] sm:$0xf]
  %v3197 = vld [vmem:[%s1 + $0x2b98] sm:$0xf]
  %v3198 = vld [vmem:[%s1 + $0x2b9c] sm:$0xf]
  %v3199 = vld [vmem:[%s1 + $0x2ba0] sm:$0xf]
  %v3200 = vld [vmem:[%s1 + $0x2ba4] sm:$0xf]
  %v3201 = vld [vmem:[%s1 + $0x2ba8] sm:$0xf]
  %v3202 = vld [vmem:[%s1 + $0x2bac] sm:$0xf]
  %v3203 = vld [vmem:[%s1 + $0x2bb0] sm:$0xf]
  %v3204 = vld [vmem:[%s1 + $0x2bb4] sm:$0xf]
  %v3205 = vld [vmem:[%s1 + $0x2bb8] sm:$0xf]
  %v3206 = vld [vmem:[%s1 + $0x2bbc] sm:$0xf]
  %v3207 = vld [vmem:[%s1 + $0x2bc0] sm:$0xf]
  %v3208 = vld [vmem:[%s1 + $0x2bc4] sm:$0xf]
  %v3209 = vld [vmem:[%s1 + $0x2bc8] sm:$0xf]
  %v3210 = vld [vmem:[%s1 + $0x2bcc] sm:$0xf]
  %v3211 = vld [vmem:[%s1 + $0x2bd0] sm:$0xf]
  %v3212 = vld [vmem:[%s1 + $0x2bd4] sm:$0xf]
  %v3213 = vld [vmem:[%s1 + $0x2bd8] sm:$0xf]
  %v3214 = vld [vmem:[%s1 + $0x2bdc] sm:$0xf]
  %v3215 = vld [vmem:[%s1 + $0x2be0] sm:$0xf]
  %v3216 = vld [vmem:[%s1 + $0x2be4] sm:$0xf]
  %v3217 = vld [vmem:[%s1 + $0x2be8] sm:$0xf]
  %v3218 = vld [vmem:[%s1 + $0x2bec] sm:$0xf]
  %v3219 = vld [vmem:[%s1 + $0x2bf0] sm:$0xf]
  %v3220 = vld [vmem:[%s1 + $0x2bf4] sm:$0xf]
  %v3221 = vld [vmem:[%s1 + $0x2bf8] sm:$0xf]
  %v3222 = vld [vmem:[%s1 + $0x2bfc] sm:$0xf]
  %v3223 = vld [vmem:[%s1 + $0x2c00] sm:$0xf]
  %v3224 = vld [vmem:[%s1 + $0x2c04] sm:$0xf]
  %v3225 = vld [vmem:[%s1 + $0x2c08] sm:$0xf]
  %v3226 = vld [vmem:[%s1 + $0x2c0c] sm:$0xf]
  %v3227 = vld [vmem:[%s1 + $0x2c10] sm:$0xf]
  %v3228 = vld [vmem:[%s1 + $0x2c14] sm:$0xf]
  %v3229 = vld [vmem:[%s1 + $0x2c18] sm:$0xf]
  %v3230 = vld [vmem:[%s1 + $0x2c1c] sm:$0xf]
  %v3231 = vld [vmem:[%s1 + $0x2c20] sm:$0xf]
  %v3232 = vld [vmem:[%s1 + $0x2c24] sm:$0xf]
  %v3233 = vld [vmem:[%s1 + $0x2c28] sm:$0xf]
  %v3234 = vld [vmem:[%s1 + $0x2c2c] sm:$0xf]
  %v3235 = vld [vmem:[%s1 + $0x2c30] sm:$0xf]
  %v3236 = vld [vmem:[%s1 + $0x2c34] sm:$0xf]
  %v3237 = vld [vmem:[%s1 + $0x2c38] sm:$0xf]
  %v3238 = vld [vmem:[%s1 + $0x2c3c] sm:$0xf]
  %v3239 = vld [vmem:[%s1 + $0x2c40] sm:$0xf]
  %v3240 = vld [vmem:[%s1 + $0x2c44] sm:$0xf]
  %v3241 = vld [vmem:[%s1 + $0x2c48] sm:$0xf]
  %v3242 = vld [vmem:[%s1 + $0x2c4c] sm:$0xf]
  %v3243 = vld [vmem:[%s1 + $0x2c50] sm:$0xf]
  %v3244 = vld [vmem:[%s1 + $0x2c54] sm:$0xf]
  %v3245 = vld [vmem:[%s1 + $0x2c58] sm:$0xf]
  %v3246 = vld [vmem:[%s1 + $0x2c5c] sm:$0xf]
  %v3247 = vld [vmem:[%s1 + $0x2c60] sm:$0xf]
  %v3248 = vld [vmem:[%s1 + $0x2c64] sm:$0xf]
  %v3249 = vld [vmem:[%s1 + $0x2c68] sm:$0xf]
  %v3250 = vld [vmem:[%s1 + $0x2c6c] sm:$0xf]
  %v3251 = vld [vmem:[%s1 + $0x2c70] sm:$0xf]
  %v3252 = vld [vmem:[%s1 + $0x2c74] sm:$0xf]
  %v3253 = vld [vmem:[%s1 + $0x2c78] sm:$0xf]
  %v3254 = vld [vmem:[%s1 + $0x2c7c] sm:$0xf]
  %v3255 = vld [vmem:[%s1 + $0x2c80] sm:$0xf]
  %v3256 = vld [vmem:[%s1 + $0x2c84] sm:$0xf]
  %v3257 = vld [vmem:[%s1 + $0x2c88] sm:$0xf]
  %v3258 = vld [vmem:[%s1 + $0x2c8c] sm:$0xf]
  %v3259 = vld [vmem:[%s1 + $0x2c90] sm:$0xf]
  %v3260 = vld [vmem:[%s1 + $0x2c94] sm:$0xf]
  %v3261 = vld [vmem:[%s1 + $0x2c98] sm:$0xf]
  %v3262 = vld [vmem:[%s1 + $0x2c9c] sm:$0xf]
  %v3263 = vld [vmem:[%s1 + $0x2ca0] sm:$0xf]
  %v3264 = vld [vmem:[%s1 + $0x2ca4] sm:$0xf]
  %v3265 = vld [vmem:[%s1 + $0x2ca8] sm:$0xf]
  %v3266 = vld [vmem:[%s1 + $0x2cac] sm:$0xf]
  %v3267 = vld [vmem:[%s1 + $0x2cb0] sm:$0xf]
  %v3268 = vld [vmem:[%s1 + $0x2cb4] sm:$0xf]
  %v3269 = vld [vmem:[%s1 + $0x2cb8] sm:$0xf]
  %v3270 = vld [vmem:[%s1 + $0x2cbc] sm:$0xf]
  %v3271 = vld [vmem:[%s1 + $0x2cc0] sm:$0xf]
  %v3272 = vld [vmem:[%s1 + $0x2cc4] sm:$0xf]
  %v3273 = vld [vmem:[%s1 + $0x2cc8] sm:$0xf]
  %v3274 = vld [vmem:[%s1 + $0x2ccc] sm:$0xf]
  %v3275 = vld [vmem:[%s1 + $0x2cd0] sm:$0xf]
  %v3276 = vld [vmem:[%s1 + $0x2cd4] sm:$0xf]
  %v3277 = vld [vmem:[%s1 + $0x2cd8] sm:$0xf]
  %v3278 = vld [vmem:[%s1 + $0x2cdc] sm:$0xf]
  %v3279 = vld [vmem:[%s1 + $0x2ce0] sm:$0xf]
  %v3280 = vld [vmem:[%s1 + $0x2ce4] sm:$0xf]
  %v3281 = vld [vmem:[%s1 + $0x2ce8] sm:$0xf]
  %v3282 = vld [vmem:[%s1 + $0x2cec] sm:$0xf]
  %v3283 = vld [vmem:[%s1 + $0x2cf0] sm:$0xf]
  %v3284 = vld [vmem:[%s1 + $0x2cf4] sm:$0xf]
  %v3285 = vld [vmem:[%s1 + $0x2cf8] sm:$0xf]
  %v3286 = vld [vmem:[%s1 + $0x2cfc] sm:$0xf]
  %v3287 = vld [vmem:[%s1 + $0x2d00] sm:$0xf]
  %v3288 = vld [vmem:[%s1 + $0x2d04] sm:$0xf]
  %v3289 = vld [vmem:[%s1 + $0x2d08] sm:$0xf]
  %v3290 = vld [vmem:[%s1 + $0x2d0c] sm:$0xf]
  %v3291 = vld [vmem:[%s1 + $0x2d10] sm:$0xf]
  %v3292 = vld [vmem:[%s1 + $0x2d14] sm:$0xf]
  %v3293 = vld [vmem:[%s1 + $0x2d18] sm:$0xf]
  %v3294 = vld [vmem:[%s1 + $0x2d1c] sm:$0xf]
  %v3295 = vld [vmem:[%s1 + $0x2d20] sm:$0xf]
  %v3296 = vld [vmem:[%s1 + $0x2d24] sm:$0xf]
  %v3297 = vld [vmem:[%s1 + $0x2d28] sm:$0xf]
  %v3298 = vld [vmem:[%s1 + $0x2d2c] sm:$0xf]
  %v3299 = vld [vmem:[%s1 + $0x2d30] sm:$0xf]
  %v3300 = vld [vmem:[%s1 + $0x2d34] sm:$0xf]
  %v3301 = vld [vmem:[%s1 + $0x2d38] sm:$0xf]
  %v3302 = vld [vmem:[%s1 + $0x2d3c] sm:$0xf]
  %v3303 = vld [vmem:[%s1 + $0x2d40] sm:$0xf]
  %v3304 = vld [vmem:[%s1 + $0x2d44] sm:$0xf]
  %v3305 = vld [vmem:[%s1 + $0x2d48] sm:$0xf]
  %v3306 = vld [vmem:[%s1 + $0x2d4c] sm:$0xf]
  %v3307 = vld [vmem:[%s1 + $0x2d50] sm:$0xf]
  %v3308 = vld [vmem:[%s1 + $0x2d54] sm:$0xf]
  %v3309 = vld [vmem:[%s1 + $0x2d58] sm:$0xf]
  %v3310 = vld [vmem:[%s1 + $0x2d5c] sm:$0xf]
  %v3311 = vld [vmem:[%s1 + $0x2d60] sm:$0xf]
  %v3312 = vld [vmem:[%s1 + $0x2d64] sm:$0xf]
  %v3313 = vld [vmem:[%s1 + $0x2d68] sm:$0xf]
  %v3314 = vld [vmem:[%s1 + $0x2d6c] sm:$0xf]
  %v3315 = vld [vmem:[%s1 + $0x2d70] sm:$0xf]
  %v3316 = vld [vmem:[%s1 + $0x2d74] sm:$0xf]
  %v3317 = vld [vmem:[%s1 + $0x2d78] sm:$0xf]
  %v3318 = vld [vmem:[%s1 + $0x2d7c] sm:$0xf]
  %v3319 = vld [vmem:[%s1 + $0x2d80] sm:$0xf]
  %v3320 = vld [vmem:[%s1 + $0x2d84] sm:$0xf]
  %v3321 = vld [vmem:[%s1 + $0x2d88] sm:$0xf]
  %v3322 = vld [vmem:[%s1 + $0x2d8c] sm:$0xf]
  %v3323 = vld [vmem:[%s1 + $0x2d90] sm:$0xf]
  %v3324 = vld [vmem:[%s1 + $0x2d94] sm:$0xf]
  %v3325 = vld [vmem:[%s1 + $0x2d98] sm:$0xf]
  %v3326 = vld [vmem:[%s1 + $0x2d9c] sm:$0xf]
  %v3327 = vld [vmem:[%s1 + $0x2da0] sm:$0xf]
  %v3328 = vld [vmem:[%s1 + $0x2da4] sm:$0xf]
  %v3329 = vld [vmem:[%s1 + $0x2da8] sm:$0xf]
  %v3330 = vld [vmem:[%s1 + $0x2dac] sm:$0xf]
  %v3331 = vld [vmem:[%s1 + $0x2db0] sm:$0xf]
  %v3332 = vld [vmem:[%s1 + $0x2db4] sm:$0xf]
  %v3333 = vld [vmem:[%s1 + $0x2db8] sm:$0xf]
  %v3334 = vld [vmem:[%s1 + $0x2dbc] sm:$0xf]
  %v3335 = vld [vmem:[%s1 + $0x2dc0] sm:$0xf]
  %v3336 = vld [vmem:[%s1 + $0x2dc4] sm:$0xf]
  %v3337 = vld [vmem:[%s1 + $0x2dc8] sm:$0xf]
  %v3338 = vld [vmem:[%s1 + $0x2dcc] sm:$0xf]
  %v3339 = vld [vmem:[%s1 + $0x2dd0] sm:$0xf]
  %v3340 = vld [vmem:[%s1 + $0x2dd4] sm:$0xf]
  %v3341 = vld [vmem:[%s1 + $0x2dd8] sm:$0xf]
  %v3342 = vld [vmem:[%s1 + $0x2ddc] sm:$0xf]
  %v3343 = vld [vmem:[%s1 + $0x2de0] sm:$0xf]
  %v3344 = vld [vmem:[%s1 + $0x2de4] sm:$0xf]
  %v3345 = vld [vmem:[%s1 + $0x2de8] sm:$0xf]
  %v3346 = vld [vmem:[%s1 + $0x2dec] sm:$0xf]
  %v3347 = vld [vmem:[%s1 + $0x2df0] sm:$0xf]
  %v3348 = vld [vmem:[%s1 + $0x2df4] sm:$0xf]
  %v3349 = vld [vmem:[%s1 + $0x2df8] sm:$0xf]
  %v3350 = vld [vmem:[%s1 + $0x2dfc] sm:$0xf]
  %v3351 = vld [vmem:[%s1 + $0x2e00] sm:$0xf]
  %v3352 = vld [vmem:[%s1 + $0x2e04] sm:$0xf]
  %v3353 = vld [vmem:[%s1 + $0x2e08] sm:$0xf]
  %v3354 = vld [vmem:[%s1 + $0x2e0c] sm:$0xf]
  %v3355 = vld [vmem:[%s1 + $0x2e10] sm:$0xf]
  %v3356 = vld [vmem:[%s1 + $0x2e14] sm:$0xf]
  %v3357 = vld [vmem:[%s1 + $0x2e18] sm:$0xf]
  %v3358 = vld [vmem:[%s1 + $0x2e1c] sm:$0xf]
  %v3359 = vld [vmem:[%s1 + $0x2e20] sm:$0xf]
  %v3360 = vld [vmem:[%s1 + $0x2e24] sm:$0xf]
  %v3361 = vld [vmem:[%s1 + $0x2e28] sm:$0xf]
  %v3362 = vld [vmem:[%s1 + $0x2e2c] sm:$0xf]
  %v3363 = vld [vmem:[%s1 + $0x2e30] sm:$0xf]
  %v3364 = vld [vmem:[%s1 + $0x2e34] sm:$0xf]
  %v3365 = vld [vmem:[%s1 + $0x2e38] sm:$0xf]
  %v3366 = vld [vmem:[%s1 + $0x2e3c] sm:$0xf]
  %v3367 = vld [vmem:[%s1 + $0x2e40] sm:$0xf]
  %v3368 = vld [vmem:[%s1 + $0x2e44] sm:$0xf]
  %v3369 = vld [vmem:[%s1 + $0x2e48] sm:$0xf]
  %v3370 = vld [vmem:[%s1 + $0x2e4c] sm:$0xf]
  %v3371 = vld [vmem:[%s1 + $0x2e50] sm:$0xf]
  %v3372 = vld [vmem:[%s1 + $0x2e54] sm:$0xf]
  %v3373 = vld [vmem:[%s1 + $0x2e58] sm:$0xf]
  %v3374 = vld [vmem:[%s1 + $0x2e5c] sm:$0xf]
  %v3375 = vld [vmem:[%s1 + $0x2e60] sm:$0xf]
  %v3376 = vld [vmem:[%s1 + $0x2e64] sm:$0xf]
  %v3377 = vld [vmem:[%s1 + $0x2e68] sm:$0xf]
  %v3378 = vld [vmem:[%s1 + $0x2e6c] sm:$0xf]
  %v3379 = vld [vmem:[%s1 + $0x2e70] sm:$0xf]
  %v3380 = vld [vmem:[%s1 + $0x2e74] sm:$0xf]
  %v3381 = vld [vmem:[%s1 + $0x2e78] sm:$0xf]
  %v3382 = vld [vmem:[%s1 + $0x2e7c] sm:$0xf]
  %v3383 = vld [vmem:[%s1 + $0x2e80] sm:$0xf]
  %v3384 = vld [vmem:[%s1 + $0x2e84] sm:$0xf]
  %v3385 = vld [vmem:[%s1 + $0x2e88] sm:$0xf]
  %v3386 = vld [vmem:[%s1 + $0x2e8c] sm:$0xf]
  %v3387 = vld [vmem:[%s1 + $0x2e90] sm:$0xf]
  %v3388 = vld [vmem:[%s1 + $0x2e94] sm:$0xf]
  %v3389 = vld [vmem:[%s1 + $0x2e98] sm:$0xf]
  %v3390 = vld [vmem:[%s1 + $0x2e9c] sm:$0xf]
  %v3391 = vld [vmem:[%s1 + $0x2ea0] sm:$0xf]
  %v3392 = vld [vmem:[%s1 + $0x2ea4] sm:$0xf]
  %v3393 = vld [vmem:[%s1 + $0x2ea8] sm:$0xf]
  %v3394 = vld [vmem:[%s1 + $0x2eac] sm:$0xf]
  %v3395 = vld [vmem:[%s1 + $0x2eb0] sm:$0xf]
  %v3396 = vld [vmem:[%s1 + $0x2eb4] sm:$0xf]
  %v3397 = vld [vmem:[%s1 + $0x2eb8] sm:$0xf]
  %v3398 = vld [vmem:[%s1 + $0x2ebc] sm:$0xf]
  %v3399 = vld [vmem:[%s1 + $0x2ec0] sm:$0xf]
  %v3400 = vld [vmem:[%s1 + $0x2ec4] sm:$0xf]
  %v3401 = vld [vmem:[%s1 + $0x2ec8] sm:$0xf]
  %v3402 = vld [vmem:[%s1 + $0x2ecc] sm:$0xf]
  %v3403 = vld [vmem:[%s1 + $0x2ed0] sm:$0xf]
  %v3404 = vld [vmem:[%s1 + $0x2ed4] sm:$0xf]
  %v3405 = vld [vmem:[%s1 + $0x2ed8] sm:$0xf]
  %v3406 = vld [vmem:[%s1 + $0x2edc] sm:$0xf]
  %v3407 = vld [vmem:[%s1 + $0x2ee0] sm:$0xf]
  %v3408 = vld [vmem:[%s1 + $0x2ee4] sm:$0xf]
  %v3409 = vld [vmem:[%s1 + $0x2ee8] sm:$0xf]
  %v3410 = vld [vmem:[%s1 + $0x2eec] sm:$0xf]
  %v3411 = vld [vmem:[%s1 + $0x2ef0] sm:$0xf]
  %v3412 = vld [vmem:[%s1 + $0x2ef4] sm:$0xf]
  %v3413 = vld [vmem:[%s1 + $0x2ef8] sm:$0xf]
  %v3414 = vld [vmem:[%s1 + $0x2efc] sm:$0xf]
  %v3415 = vld [vmem:[%s1 + $0x2f00] sm:$0xf]
  %v3416 = vld [vmem:[%s1 + $0x2f04] sm:$0xf]
  %v3417 = vld [vmem:[%s1 + $0x2f08] sm:$0xf]
  %v3418 = vld [vmem:[%s1 + $0x2f0c] sm:$0xf]
  %v3419 = vld [vmem:[%s1 + $0x2f10] sm:$0xf]
  %v3420 = vld [vmem:[%s1 + $0x2f14] sm:$0xf]
  %v3421 = vld [vmem:[%s1 + $0x2f18] sm:$0xf]
  %v3422 = vld [vmem:[%s1 + $0x2f1c] sm:$0xf]
  %v3423 = vld [vmem:[%s1 + $0x2f20] sm:$0xf]
  %v3424 = vld [vmem:[%s1 + $0x2f24] sm:$0xf]
  %v3425 = vld [vmem:[%s1 + $0x2f28] sm:$0xf]
  %v3426 = vld [vmem:[%s1 + $0x2f2c] sm:$0xf]
  %v3427 = vld [vmem:[%s1 + $0x2f30] sm:$0xf]
  %v3428 = vld [vmem:[%s1 + $0x2f34] sm:$0xf]
  %v3429 = vld [vmem:[%s1 + $0x2f38] sm:$0xf]
  %v3430 = vld [vmem:[%s1 + $0x2f3c] sm:$0xf]
  %v3431 = vld [vmem:[%s1 + $0x2f40] sm:$0xf]
  %v3432 = vld [vmem:[%s1 + $0x2f44] sm:$0xf]
  %v3433 = vld [vmem:[%s1 + $0x2f48] sm:$0xf]
  %v3434 = vld [vmem:[%s1 + $0x2f4c] sm:$0xf]
  %v3435 = vld [vmem:[%s1 + $0x2f50] sm:$0xf]
  %v3436 = vld [vmem:[%s1 + $0x2f54] sm:$0xf]
  %v3437 = vld [vmem:[%s1 + $0x2f58] sm:$0xf]
  %v3438 = vld [vmem:[%s1 + $0x2f5c] sm:$0xf]
  %v3439 = vld [vmem:[%s1 + $0x2f60] sm:$0xf]
  %v3440 = vld [vmem:[%s1 + $0x2f64] sm:$0xf]
  %v3441 = vld [vmem:[%s1 + $0x2f68] sm:$0xf]
  %v3442 = vld [vmem:[%s1 + $0x2f6c] sm:$0xf]
  %v3443 = vld [vmem:[%s1 + $0x2f70] sm:$0xf]
  %v3444 = vld [vmem:[%s1 + $0x2f74] sm:$0xf]
  %v3445 = vld [vmem:[%s1 + $0x2f78] sm:$0xf]
  %v3446 = vld [vmem:[%s1 + $0x2f7c] sm:$0xf]
  %v3447 = vld [vmem:[%s1 + $0x2f80] sm:$0xf]
  %v3448 = vld [vmem:[%s1 + $0x2f84] sm:$0xf]
  %v3449 = vld [vmem:[%s1 + $0x2f88] sm:$0xf]
  %v3450 = vld [vmem:[%s1 + $0x2f8c] sm:$0xf]
  %v3451 = vld [vmem:[%s1 + $0x2f90] sm:$0xf]
  %v3452 = vld [vmem:[%s1 + $0x2f94] sm:$0xf]
  %v3453 = vld [vmem:[%s1 + $0x2f98] sm:$0xf]
  %v3454 = vld [vmem:[%s1 + $0x2f9c] sm:$0xf]
  %v3455 = vld [vmem:[%s1 + $0x2fa0] sm:$0xf]
  %v3456 = vld [vmem:[%s1 + $0x2fa4] sm:$0xf]
  %v3457 = vld [vmem:[%s1 + $0x2fa8] sm:$0xf]
  %v3458 = vld [vmem:[%s1 + $0x2fac] sm:$0xf]
  %v3459 = vld [vmem:[%s1 + $0x2fb0] sm:$0xf]
  %v3460 = vld [vmem:[%s1 + $0x2fb4] sm:$0xf]
  %v3461 = vld [vmem:[%s1 + $0x2fb8] sm:$0xf]
  %v3462 = vld [vmem:[%s1 + $0x2fbc] sm:$0xf]
  %v3463 = vld [vmem:[%s1 + $0x2fc0] sm:$0xf]
  %v3464 = vld [vmem:[%s1 + $0x2fc4] sm:$0xf]
  %v3465 = vld [vmem:[%s1 + $0x2fc8] sm:$0xf]
  %v3466 = vld [vmem:[%s1 + $0x2fcc] sm:$0xf]
  %v3467 = vld [vmem:[%s1 + $0x2fd0] sm:$0xf]
  %v3468 = vld [vmem:[%s1 + $0x2fd4] sm:$0xf]
  %v3469 = vld [vmem:[%s1 + $0x2fd8] sm:$0xf]
  %v3470 = vld [vmem:[%s1 + $0x2fdc] sm:$0xf]
  %v3471 = vld [vmem:[%s1 + $0x2fe0] sm:$0xf]
  %v3472 = vld [vmem:[%s1 + $0x2fe4] sm:$0xf]
  %v3473 = vld [vmem:[%s1 + $0x2fe8] sm:$0xf]
  %v3474 = vld [vmem:[%s1 + $0x2fec] sm:$0xf]
  %v3475 = vld [vmem:[%s1 + $0x2ff0] sm:$0xf]
  %v3476 = vld [vmem:[%s1 + $0x2ff4] sm:$0xf]
  %v3477 = vld [vmem:[%s1 + $0x2ff8] sm:$0xf]
  %v3478 = vld [vmem:[%s1 + $0x2ffc] sm:$0xf]
  %v3479 = vld [vmem:[%s1 + $0x3000] sm:$0xf]
  %v3480 = vld [vmem:[%s1 + $0x3004] sm:$0xf]
  %v3481 = vld [vmem:[%s1 + $0x3008] sm:$0xf]
  %v3482 = vld [vmem:[%s1 + $0x300c] sm:$0xf]
  %v3483 = vld [vmem:[%s1 + $0x3010] sm:$0xf]
  %v3484 = vld [vmem:[%s1 + $0x3014] sm:$0xf]
  %v3485 = vld [vmem:[%s1 + $0x3018] sm:$0xf]
  %v3486 = vld [vmem:[%s1 + $0x301c] sm:$0xf]
  %v3487 = vld [vmem:[%s1 + $0x3020] sm:$0xf]
  %v3488 = vld [vmem:[%s1 + $0x3024] sm:$0xf]
  %v3489 = vld [vmem:[%s1 + $0x3028] sm:$0xf]
  %v3490 = vld [vmem:[%s1 + $0x302c] sm:$0xf]
  %v3491 = vld [vmem:[%s1 + $0x3030] sm:$0xf]
  %v3492 = vld [vmem:[%s1 + $0x3034] sm:$0xf]
  %v3493 = vld [vmem:[%s1 + $0x3038] sm:$0xf]
  %v3494 = vld [vmem:[%s1 + $0x303c] sm:$0xf]
  %v3495 = vld [vmem:[%s1 + $0x3040] sm:$0xf]
  %v3496 = vld [vmem:[%s1 + $0x3044] sm:$0xf]
  %v3497 = vld [vmem:[%s1 + $0x3048] sm:$0xf]
  %v3498 = vld [vmem:[%s1 + $0x304c] sm:$0xf]
  %v3499 = vld [vmem:[%s1 + $0x3050] sm:$0xf]
  %v3500 = vld [vmem:[%s1 + $0x3054] sm:$0xf]
  %v3501 = vld [vmem:[%s1 + $0x3058] sm:$0xf]
  %v3502 = vld [vmem:[%s1 + $0x305c] sm:$0xf]
  %v3503 = vld [vmem:[%s1 + $0x3060] sm:$0xf]
  %v3504 = vld [vmem:[%s1 + $0x3064] sm:$0xf]
  %v3505 = vld [vmem:[%s1 + $0x3068] sm:$0xf]
  %v3506 = vld [vmem:[%s1 + $0x306c] sm:$0xf]
  %v3507 = vld [vmem:[%s1 + $0x3070] sm:$0xf]
  %v3508 = vld [vmem:[%s1 + $0x3074] sm:$0xf]
  %v3509 = vld [vmem:[%s1 + $0x3078] sm:$0xf]
  %v3510 = vld [vmem:[%s1 + $0x307c] sm:$0xf]
  %v3511 = vld [vmem:[%s1 + $0x3080] sm:$0xf]
  %v3512 = vld [vmem:[%s1 + $0x3084] sm:$0xf]
  %v3513 = vld [vmem:[%s1 + $0x3088] sm:$0xf]
  %v3514 = vld [vmem:[%s1 + $0x308c] sm:$0xf]
  %v3515 = vld [vmem:[%s1 + $0x3090] sm:$0xf]
  %v3516 = vld [vmem:[%s1 + $0x3094] sm:$0xf]
  %v3517 = vld [vmem:[%s1 + $0x3098] sm:$0xf]
  %v3518 = vld [vmem:[%s1 + $0x309c] sm:$0xf]
  %v3519 = vld [vmem:[%s1 + $0x30a0] sm:$0xf]
  %v3520 = vld [vmem:[%s1 + $0x30a4] sm:$0xf]
  %v3521 = vld [vmem:[%s1 + $0x30a8] sm:$0xf]
  %v3522 = vld [vmem:[%s1 + $0x30ac] sm:$0xf]
  %v3523 = vld [vmem:[%s1 + $0x30b0] sm:$0xf]
  %v3524 = vld [vmem:[%s1 + $0x30b4] sm:$0xf]
  %v3525 = vld [vmem:[%s1 + $0x30b8] sm:$0xf]
  %v3526 = vld [vmem:[%s1 + $0x30bc] sm:$0xf]
  %v3527 = vld [vmem:[%s1 + $0x30c0] sm:$0xf]
  %v3528 = vld [vmem:[%s1 + $0x30c4] sm:$0xf]
  %v3529 = vld [vmem:[%s1 + $0x30c8] sm:$0xf]
  %v3530 = vld [vmem:[%s1 + $0x30cc] sm:$0xf]
  %v3531 = vld [vmem:[%s1 + $0x30d0] sm:$0xf]
  %v3532 = vld [vmem:[%s1 + $0x30d4] sm:$0xf]
  %v3533 = vld [vmem:[%s1 + $0x30d8] sm:$0xf]
  %v3534 = vld [vmem:[%s1 + $0x30dc] sm:$0xf]
  %v3535 = vld [vmem:[%s1 + $0x30e0] sm:$0xf]
  %v3536 = vld [vmem:[%s1 + $0x30e4] sm:$0xf]
  %v3537 = vld [vmem:[%s1 + $0x30e8] sm:$0xf]
  %v3538 = vld [vmem:[%s1 + $0x30ec] sm:$0xf]
  %v3539 = vld [vmem:[%s1 + $0x30f0] sm:$0xf]
  %v3540 = vld [vmem:[%s1 + $0x30f4] sm:$0xf]
  %v3541 = vld [vmem:[%s1 + $0x30f8] sm:$0xf]
  %v3542 = vld [vmem:[%s1 + $0x30fc] sm:$0xf]
  %v3543 = vld [vmem:[%s2] sm:$0x1]
  %v3545 = vlaneseq
  %v3546 = vshrl.u32 %v3545, 7
  %v3547 = vsub.s32 0, %v3546
  %v3548 = vrot.slane %v3543, %v3547
  %v6686 = vunpack.c.l.b16 %v407
  %v6687 = vunpack.c.l.b16 %v408
  %v6688 = vunpack.c.l.b16 %v409
  %v6689 = vunpack.c.l.b16 %v410
  %v6690 = vunpack.c.l.b16 %v411
  %v6691 = vunpack.c.l.b16 %v412
  %v6692 = vunpack.c.l.b16 %v413
  %v6693 = vunpack.c.l.b16 %v414
  %v6694 = vunpack.c.l.b16 %v415
  %v6695 = vunpack.c.l.b16 %v416
  %v6696 = vunpack.c.l.b16 %v417
  %v6697 = vunpack.c.l.b16 %v418
  %v6698 = vunpack.c.l.b16 %v419
  %v6699 = vunpack.c.l.b16 %v420
  %v6700 = vunpack.c.l.b16 %v421
  %v6701 = vunpack.c.l.b16 %v422
  %v6702 = vunpack.c.l.b16 %v423
  %v6703 = vunpack.c.l.b16 %v424
  %v6704 = vunpack.c.l.b16 %v425
  %v6705 = vunpack.c.l.b16 %v426
  %v6706 = vunpack.c.l.b16 %v427
  %v6707 = vunpack.c.l.b16 %v428
  %v6708 = vunpack.c.l.b16 %v429
  %v6709 = vunpack.c.l.b16 %v430
  %v6710 = vunpack.c.l.b16 %v431
  %v6711 = vunpack.c.l.b16 %v432
  %v6712 = vunpack.c.l.b16 %v433
  %v6713 = vunpack.c.l.b16 %v434
  %v6714 = vunpack.c.l.b16 %v435
  %v6715 = vunpack.c.l.b16 %v436
  %v6716 = vunpack.c.l.b16 %v437
  %v6717 = vunpack.c.l.b16 %v438
  %v6718 = vunpack.c.l.b16 %v439
  %v6719 = vunpack.c.l.b16 %v440
  %v6720 = vunpack.c.l.b16 %v441
  %v6721 = vunpack.c.l.b16 %v442
  %v6722 = vunpack.c.l.b16 %v443
  %v6723 = vunpack.c.l.b16 %v444
  %v6724 = vunpack.c.l.b16 %v445
  %v6725 = vunpack.c.l.b16 %v446
  %v6726 = vunpack.c.l.b16 %v447
  %v6727 = vunpack.c.l.b16 %v448
  %v6728 = vunpack.c.l.b16 %v449
  %v6729 = vunpack.c.l.b16 %v450
  %v6730 = vunpack.c.l.b16 %v451
  %v6731 = vunpack.c.l.b16 %v452
  %v6732 = vunpack.c.l.b16 %v453
  %v6733 = vunpack.c.l.b16 %v454
  %v6734 = vunpack.c.l.b16 %v455
  %v6735 = vunpack.c.l.b16 %v456
  %v6736 = vunpack.c.l.b16 %v457
  %v6737 = vunpack.c.l.b16 %v458
  %v6738 = vunpack.c.l.b16 %v459
  %v6739 = vunpack.c.l.b16 %v460
  %v6740 = vunpack.c.l.b16 %v461
  %v6741 = vunpack.c.l.b16 %v462
  %v6742 = vunpack.c.l.b16 %v463
  %v6743 = vunpack.c.l.b16 %v464
  %v6744 = vunpack.c.l.b16 %v465
  %v6745 = vunpack.c.l.b16 %v466
  %v6746 = vunpack.c.l.b16 %v467
  %v6747 = vunpack.c.l.b16 %v468
  %v6748 = vunpack.c.l.b16 %v469
  %v6749 = vunpack.c.l.b16 %v470
  %v6750 = vunpack.c.l.b16 %v471
  %v6751 = vunpack.c.l.b16 %v472
  %v6752 = vunpack.c.l.b16 %v473
  %v6753 = vunpack.c.l.b16 %v474
  %v6754 = vunpack.c.l.b16 %v475
  %v6755 = vunpack.c.l.b16 %v476
  %v6756 = vunpack.c.l.b16 %v477
  %v6757 = vunpack.c.l.b16 %v478
  %v6758 = vunpack.c.l.b16 %v479
  %v6759 = vunpack.c.l.b16 %v480
  %v6760 = vunpack.c.l.b16 %v481
  %v6761 = vunpack.c.l.b16 %v482
  %v6762 = vunpack.c.l.b16 %v483
  %v6763 = vunpack.c.l.b16 %v484
  %v6764 = vunpack.c.l.b16 %v485
  %v6765 = vunpack.c.l.b16 %v486
  %v6766 = vunpack.c.l.b16 %v487
  %v6767 = vunpack.c.l.b16 %v488
  %v6768 = vunpack.c.l.b16 %v489
  %v6769 = vunpack.c.l.b16 %v490
  %v6770 = vunpack.c.l.b16 %v491
  %v6771 = vunpack.c.l.b16 %v492
  %v6772 = vunpack.c.l.b16 %v493
  %v6773 = vunpack.c.l.b16 %v494
  %v6774 = vunpack.c.l.b16 %v495
  %v6775 = vunpack.c.l.b16 %v496
  %v6776 = vunpack.c.l.b16 %v497
  %v6777 = vunpack.c.l.b16 %v498
  %v6778 = vunpack.c.l.b16 %v499
  %v6779 = vunpack.c.l.b16 %v500
  %v6780 = vunpack.c.l.b16 %v501
  %v6781 = vunpack.c.l.b16 %v502
  %v6782 = vunpack.c.l.b16 %v503
  %v6783 = vunpack.c.l.b16 %v504
  %v6784 = vunpack.c.l.b16 %v505
  %v6785 = vunpack.c.l.b16 %v506
  %v6786 = vunpack.c.l.b16 %v507
  %v6787 = vunpack.c.l.b16 %v508
  %v6788 = vunpack.c.l.b16 %v509
  %v6789 = vunpack.c.l.b16 %v510
  %v6790 = vunpack.c.l.b16 %v511
  %v6791 = vunpack.c.l.b16 %v512
  %v6792 = vunpack.c.l.b16 %v513
  %v6793 = vunpack.c.l.b16 %v514
  %v6794 = vunpack.c.l.b16 %v515
  %v6795 = vunpack.c.l.b16 %v516
  %v6796 = vunpack.c.l.b16 %v517
  %v6797 = vunpack.c.l.b16 %v518
  %v6798 = vunpack.c.l.b16 %v519
  %v6799 = vunpack.c.l.b16 %v520
  %v6800 = vunpack.c.l.b16 %v521
  %v6801 = vunpack.c.l.b16 %v522
  %v6802 = vunpack.c.l.b16 %v523
  %v6803 = vunpack.c.l.b16 %v524
  %v6804 = vunpack.c.l.b16 %v525
  %v6805 = vunpack.c.l.b16 %v526
  %v6806 = vunpack.c.l.b16 %v527
  %v6807 = vunpack.c.l.b16 %v528
  %v6808 = vunpack.c.l.b16 %v529
  %v6809 = vunpack.c.l.b16 %v530
  %v6810 = vunpack.c.l.b16 %v531
  %v6811 = vunpack.c.l.b16 %v532
  %v6812 = vunpack.c.l.b16 %v533
  %v6813 = vunpack.c.l.b16 %v534
  %v6814 = vunpack.c.l.b16 %v535
  %v6815 = vunpack.c.l.b16 %v536
  %v6816 = vunpack.c.l.b16 %v537
  %v6817 = vunpack.c.l.b16 %v538
  %v6818 = vunpack.c.l.b16 %v539
  %v6819 = vunpack.c.l.b16 %v540
  %v6820 = vunpack.c.l.b16 %v541
  %v6821 = vunpack.c.l.b16 %v542
  %v6822 = vunpack.c.l.b16 %v543
  %v6823 = vunpack.c.l.b16 %v544
  %v6824 = vunpack.c.l.b16 %v545
  %v6825 = vunpack.c.l.b16 %v546
  %v6826 = vunpack.c.l.b16 %v547
  %v6827 = vunpack.c.l.b16 %v548
  %v6828 = vunpack.c.l.b16 %v549
  %v6829 = vunpack.c.l.b16 %v550
  %v6830 = vunpack.c.l.b16 %v551
  %v6831 = vunpack.c.l.b16 %v552
  %v6832 = vunpack.c.l.b16 %v553
  %v6833 = vunpack.c.l.b16 %v554
  %v6834 = vunpack.c.l.b16 %v555
  %v6835 = vunpack.c.l.b16 %v556
  %v6836 = vunpack.c.l.b16 %v557
  %v6837 = vunpack.c.l.b16 %v558
  %v6838 = vunpack.c.l.b16 %v559
  %v6839 = vunpack.c.l.b16 %v560
  %v6840 = vunpack.c.l.b16 %v561
  %v6841 = vunpack.c.l.b16 %v562
  %v6842 = vunpack.c.l.b16 %v563
  %v6843 = vunpack.c.l.b16 %v564
  %v6844 = vunpack.c.l.b16 %v565
  %v6845 = vunpack.c.l.b16 %v566
  %v6846 = vunpack.c.l.b16 %v567
  %v6847 = vunpack.c.l.b16 %v568
  %v6848 = vunpack.c.l.b16 %v569
  %v6849 = vunpack.c.l.b16 %v570
  %v6850 = vunpack.c.l.b16 %v571
  %v6851 = vunpack.c.l.b16 %v572
  %v6852 = vunpack.c.l.b16 %v573
  %v6853 = vunpack.c.l.b16 %v574
  %v6854 = vunpack.c.l.b16 %v575
  %v6855 = vunpack.c.l.b16 %v576
  %v6856 = vunpack.c.l.b16 %v577
  %v6857 = vunpack.c.l.b16 %v578
  %v6858 = vunpack.c.l.b16 %v579
  %v6859 = vunpack.c.l.b16 %v580
  %v6860 = vunpack.c.l.b16 %v581
  %v6861 = vunpack.c.l.b16 %v582
  %v6862 = vunpack.c.l.b16 %v583
  %v6863 = vunpack.c.l.b16 %v584
  %v6864 = vunpack.c.l.b16 %v585
  %v6865 = vunpack.c.l.b16 %v586
  %v6866 = vunpack.c.l.b16 %v587
  %v6867 = vunpack.c.l.b16 %v588
  %v6868 = vunpack.c.l.b16 %v589
  %v6869 = vunpack.c.l.b16 %v590
  %v6870 = vunpack.c.l.b16 %v591
  %v6871 = vunpack.c.l.b16 %v592
  %v6872 = vunpack.c.l.b16 %v593
  %v6873 = vunpack.c.l.b16 %v594
  %v6874 = vunpack.c.l.b16 %v595
  %v6875 = vunpack.c.l.b16 %v596
  %v6876 = vunpack.c.l.b16 %v597
  %v6877 = vunpack.c.l.b16 %v598
  %v6878 = vunpack.c.l.b16 %v599
  %v6879 = vunpack.c.l.b16 %v600
  %v6880 = vunpack.c.l.b16 %v601
  %v6881 = vunpack.c.l.b16 %v602
  %v6882 = vunpack.c.l.b16 %v603
  %v6883 = vunpack.c.l.b16 %v604
  %v6884 = vunpack.c.l.b16 %v605
  %v6885 = vunpack.c.l.b16 %v606
  %v6886 = vunpack.c.l.b16 %v607
  %v6887 = vunpack.c.l.b16 %v608
  %v6888 = vunpack.c.l.b16 %v609
  %v6889 = vunpack.c.l.b16 %v610
  %v6890 = vunpack.c.l.b16 %v611
  %v6891 = vunpack.c.l.b16 %v612
  %v6892 = vunpack.c.l.b16 %v613
  %v6893 = vunpack.c.l.b16 %v614
  %v6894 = vunpack.c.l.b16 %v615
  %v6895 = vunpack.c.l.b16 %v616
  %v6896 = vunpack.c.l.b16 %v617
  %v6897 = vunpack.c.l.b16 %v618
  %v6898 = vunpack.c.l.b16 %v619
  %v6899 = vunpack.c.l.b16 %v620
  %v6900 = vunpack.c.l.b16 %v621
  %v6901 = vunpack.c.l.b16 %v622
  %v6902 = vunpack.c.l.b16 %v623
  %v6903 = vunpack.c.l.b16 %v624
  %v6904 = vunpack.c.l.b16 %v625
  %v6905 = vunpack.c.l.b16 %v626
  %v6906 = vunpack.c.l.b16 %v627
  %v6907 = vunpack.c.l.b16 %v628
  %v6908 = vunpack.c.l.b16 %v629
  %v6909 = vunpack.c.l.b16 %v630
  %v6910 = vunpack.c.l.b16 %v631
  %v6911 = vunpack.c.l.b16 %v632
  %v6912 = vunpack.c.l.b16 %v633
  %v6913 = vunpack.c.l.b16 %v634
  %v6914 = vunpack.c.l.b16 %v635
  %v6915 = vunpack.c.l.b16 %v636
  %v6916 = vunpack.c.l.b16 %v637
  %v6917 = vunpack.c.l.b16 %v638
  %v6918 = vunpack.c.l.b16 %v639
  %v6919 = vunpack.c.l.b16 %v640
  %v6920 = vunpack.c.l.b16 %v641
  %v6921 = vunpack.c.l.b16 %v642
  %v6922 = vunpack.c.l.b16 %v643
  %v6923 = vunpack.c.l.b16 %v644
  %v6924 = vunpack.c.l.b16 %v645
  %v6925 = vunpack.c.l.b16 %v646
  %v6926 = vunpack.c.l.b16 %v647
  %v6927 = vunpack.c.l.b16 %v648
  %v6928 = vunpack.c.l.b16 %v649
  %v6929 = vunpack.c.l.b16 %v650
  %v6930 = vunpack.c.l.b16 %v651
  %v6931 = vunpack.c.l.b16 %v652
  %v6932 = vunpack.c.l.b16 %v653
  %v6933 = vunpack.c.l.b16 %v654
  %v6934 = vunpack.c.l.b16 %v655
  %v6935 = vunpack.c.l.b16 %v656
  %v6936 = vunpack.c.l.b16 %v657
  %v6937 = vunpack.c.l.b16 %v658
  %v6938 = vunpack.c.l.b16 %v659
  %v6939 = vunpack.c.l.b16 %v660
  %v6940 = vunpack.c.l.b16 %v661
  %v6941 = vunpack.c.l.b16 %v662
  %v6942 = vunpack.c.l.b16 %v663
  %v6943 = vunpack.c.l.b16 %v664
  %v6944 = vunpack.c.l.b16 %v665
  %v6945 = vunpack.c.l.b16 %v666
  %v6946 = vunpack.c.l.b16 %v667
  %v6947 = vunpack.c.l.b16 %v668
  %v6948 = vunpack.c.l.b16 %v669
  %v6949 = vunpack.c.l.b16 %v670
  %v6950 = vunpack.c.l.b16 %v671
  %v6951 = vunpack.c.l.b16 %v672
  %v6952 = vunpack.c.l.b16 %v673
  %v6953 = vunpack.c.l.b16 %v674
  %v6954 = vunpack.c.l.b16 %v675
  %v6955 = vunpack.c.l.b16 %v676
  %v6956 = vunpack.c.l.b16 %v677
  %v6957 = vunpack.c.l.b16 %v678
  %v6958 = vunpack.c.l.b16 %v679
  %v6959 = vunpack.c.l.b16 %v680
  %v6960 = vunpack.c.l.b16 %v681
  %v6961 = vunpack.c.l.b16 %v682
  %v6962 = vunpack.c.l.b16 %v683
  %v6963 = vunpack.c.l.b16 %v684
  %v6964 = vunpack.c.l.b16 %v685
  %v6965 = vunpack.c.l.b16 %v686
  %v6966 = vunpack.c.l.b16 %v687
  %v6967 = vunpack.c.l.b16 %v688
  %v6968 = vunpack.c.l.b16 %v689
  %v6969 = vunpack.c.l.b16 %v690
  %v6970 = vunpack.c.l.b16 %v691
  %v6971 = vunpack.c.l.b16 %v692
  %v6972 = vunpack.c.l.b16 %v693
  %v6973 = vunpack.c.l.b16 %v694
  %v6974 = vunpack.c.l.b16 %v695
  %v6975 = vunpack.c.l.b16 %v696
  %v6976 = vunpack.c.l.b16 %v697
  %v6977 = vunpack.c.l.b16 %v698
  %v6978 = vunpack.c.l.b16 %v699
  %v6979 = vunpack.c.l.b16 %v700
  %v6980 = vunpack.c.l.b16 %v701
  %v6981 = vunpack.c.l.b16 %v702
  %v6982 = vunpack.c.l.b16 %v703
  %v6983 = vunpack.c.l.b16 %v704
  %v6984 = vunpack.c.l.b16 %v705
  %v6985 = vunpack.c.l.b16 %v706
  %v6986 = vunpack.c.l.b16 %v707
  %v6987 = vunpack.c.l.b16 %v708
  %v6988 = vunpack.c.l.b16 %v709
  %v6989 = vunpack.c.l.b16 %v710
  %v6990 = vunpack.c.l.b16 %v711
  %v6991 = vunpack.c.l.b16 %v712
  %v6992 = vunpack.c.l.b16 %v713
  %v6993 = vunpack.c.l.b16 %v714
  %v6994 = vunpack.c.l.b16 %v715
  %v6995 = vunpack.c.l.b16 %v716
  %v6996 = vunpack.c.l.b16 %v717
  %v6997 = vunpack.c.l.b16 %v718
  %v6998 = vunpack.c.l.b16 %v719
  %v6999 = vunpack.c.l.b16 %v720
  %v7000 = vunpack.c.l.b16 %v721
  %v7001 = vunpack.c.l.b16 %v722
  %v7002 = vunpack.c.l.b16 %v723
  %v7003 = vunpack.c.l.b16 %v724
  %v7004 = vunpack.c.l.b16 %v725
  %v7005 = vunpack.c.l.b16 %v726
  %v7006 = vunpack.c.l.b16 %v727
  %v7007 = vunpack.c.l.b16 %v728
  %v7008 = vunpack.c.l.b16 %v729
  %v7009 = vunpack.c.l.b16 %v730
  %v7010 = vunpack.c.l.b16 %v731
  %v7011 = vunpack.c.l.b16 %v732
  %v7012 = vunpack.c.l.b16 %v733
  %v7013 = vunpack.c.l.b16 %v734
  %v7014 = vunpack.c.l.b16 %v735
  %v7015 = vunpack.c.l.b16 %v736
  %v7016 = vunpack.c.l.b16 %v737
  %v7017 = vunpack.c.l.b16 %v738
  %v7018 = vunpack.c.l.b16 %v739
  %v7019 = vunpack.c.l.b16 %v740
  %v7020 = vunpack.c.l.b16 %v741
  %v7021 = vunpack.c.l.b16 %v742
  %v7022 = vunpack.c.l.b16 %v743
  %v7023 = vunpack.c.l.b16 %v744
  %v7024 = vunpack.c.l.b16 %v745
  %v7025 = vunpack.c.l.b16 %v746
  %v7026 = vunpack.c.l.b16 %v747
  %v7027 = vunpack.c.l.b16 %v748
  %v7028 = vunpack.c.l.b16 %v749
  %v7029 = vunpack.c.l.b16 %v750
  %v7030 = vunpack.c.l.b16 %v751
  %v7031 = vunpack.c.l.b16 %v752
  %v7032 = vunpack.c.l.b16 %v753
  %v7033 = vunpack.c.l.b16 %v754
  %v7034 = vunpack.c.l.b16 %v755
  %v7035 = vunpack.c.l.b16 %v756
  %v7036 = vunpack.c.l.b16 %v757
  %v7037 = vunpack.c.l.b16 %v758
  %v7038 = vunpack.c.l.b16 %v759
  %v7039 = vunpack.c.l.b16 %v760
  %v7040 = vunpack.c.l.b16 %v761
  %v7041 = vunpack.c.l.b16 %v762
  %v7042 = vunpack.c.l.b16 %v763
  %v7043 = vunpack.c.l.b16 %v764
  %v7044 = vunpack.c.l.b16 %v765
  %v7045 = vunpack.c.l.b16 %v766
  %v7046 = vunpack.c.l.b16 %v767
  %v7047 = vunpack.c.l.b16 %v768
  %v7048 = vunpack.c.l.b16 %v769
  %v7049 = vunpack.c.l.b16 %v770
  %v7050 = vunpack.c.l.b16 %v771
  %v7051 = vunpack.c.l.b16 %v772
  %v7052 = vunpack.c.l.b16 %v773
  %v7053 = vunpack.c.l.b16 %v774
  %v7054 = vunpack.c.l.b16 %v775
  %v7055 = vunpack.c.l.b16 %v776
  %v7056 = vunpack.c.l.b16 %v777
  %v7057 = vunpack.c.l.b16 %v778
  %v7058 = vunpack.c.l.b16 %v779
  %v7059 = vunpack.c.l.b16 %v780
  %v7060 = vunpack.c.l.b16 %v781
  %v7061 = vunpack.c.l.b16 %v782
  %v7062 = vunpack.c.l.b16 %v783
  %v7063 = vunpack.c.l.b16 %v784
  %v7064 = vunpack.c.l.b16 %v785
  %v7065 = vunpack.c.l.b16 %v786
  %v7066 = vunpack.c.l.b16 %v787
  %v7067 = vunpack.c.l.b16 %v788
  %v7068 = vunpack.c.l.b16 %v789
  %v7069 = vunpack.c.l.b16 %v790
  %v7070 = vunpack.c.l.b16 %v791
  %v7071 = vunpack.c.l.b16 %v792
  %v7072 = vunpack.c.l.b16 %v793
  %v7073 = vunpack.c.l.b16 %v794
  %v7074 = vunpack.c.l.b16 %v795
  %v7075 = vunpack.c.l.b16 %v796
  %v7076 = vunpack.c.l.b16 %v797
  %v7077 = vunpack.c.l.b16 %v798
  %v7078 = vunpack.c.l.b16 %v799
  %v7079 = vunpack.c.l.b16 %v800
  %v7080 = vunpack.c.l.b16 %v801
  %v7081 = vunpack.c.l.b16 %v802
  %v7082 = vunpack.c.l.b16 %v803
  %v7083 = vunpack.c.l.b16 %v804
  %v7084 = vunpack.c.l.b16 %v805
  %v7085 = vunpack.c.l.b16 %v806
  %v7086 = vunpack.c.l.b16 %v807
  %v7087 = vunpack.c.l.b16 %v808
  %v7088 = vunpack.c.l.b16 %v809
  %v7089 = vunpack.c.l.b16 %v810
  %v7090 = vunpack.c.l.b16 %v811
  %v7091 = vunpack.c.l.b16 %v812
  %v7092 = vunpack.c.l.b16 %v813
  %v7093 = vunpack.c.l.b16 %v814
  %v7094 = vunpack.c.l.b16 %v815
  %v7095 = vunpack.c.l.b16 %v816
  %v7096 = vunpack.c.l.b16 %v817
  %v7097 = vunpack.c.l.b16 %v818
  %v7098 = vunpack.c.l.b16 %v819
  %v7099 = vunpack.c.l.b16 %v820
  %v7100 = vunpack.c.l.b16 %v821
  %v7101 = vunpack.c.l.b16 %v822
  %v7102 = vunpack.c.l.b16 %v823
  %v7103 = vunpack.c.l.b16 %v824
  %v7104 = vunpack.c.l.b16 %v825
  %v7105 = vunpack.c.l.b16 %v826
  %v7106 = vunpack.c.l.b16 %v827
  %v7107 = vunpack.c.l.b16 %v828
  %v7108 = vunpack.c.l.b16 %v829
  %v7109 = vunpack.c.l.b16 %v830
  %v7110 = vunpack.c.l.b16 %v831
  %v7111 = vunpack.c.l.b16 %v832
  %v7112 = vunpack.c.l.b16 %v833
  %v7113 = vunpack.c.l.b16 %v834
  %v7114 = vunpack.c.l.b16 %v835
  %v7115 = vunpack.c.l.b16 %v836
  %v7116 = vunpack.c.l.b16 %v837
  %v7117 = vunpack.c.l.b16 %v838
  %v7118 = vunpack.c.l.b16 %v839
  %v7119 = vunpack.c.l.b16 %v840
  %v7120 = vunpack.c.l.b16 %v841
  %v7121 = vunpack.c.l.b16 %v842
  %v7122 = vunpack.c.l.b16 %v843
  %v7123 = vunpack.c.l.b16 %v844
  %v7124 = vunpack.c.l.b16 %v845
  %v7125 = vunpack.c.l.b16 %v846
  %v7126 = vunpack.c.l.b16 %v847
  %v7127 = vunpack.c.l.b16 %v848
  %v7128 = vunpack.c.l.b16 %v849
  %v7129 = vunpack.c.l.b16 %v850
  %v7130 = vunpack.c.l.b16 %v851
  %v7131 = vunpack.c.l.b16 %v852
  %v7132 = vunpack.c.l.b16 %v853
  %v7133 = vunpack.c.l.b16 %v854
  %v7134 = vunpack.c.l.b16 %v855
  %v7135 = vunpack.c.l.b16 %v856
  %v7136 = vunpack.c.l.b16 %v857
  %v7137 = vunpack.c.l.b16 %v858
  %v7138 = vunpack.c.l.b16 %v859
  %v7139 = vunpack.c.l.b16 %v860
  %v7140 = vunpack.c.l.b16 %v861
  %v7141 = vunpack.c.l.b16 %v862
  %v7142 = vunpack.c.l.b16 %v863
  %v7143 = vunpack.c.l.b16 %v864
  %v7144 = vunpack.c.l.b16 %v865
  %v7145 = vunpack.c.l.b16 %v866
  %v7146 = vunpack.c.l.b16 %v867
  %v7147 = vunpack.c.l.b16 %v868
  %v7148 = vunpack.c.l.b16 %v869
  %v7149 = vunpack.c.l.b16 %v870
  %v7150 = vunpack.c.l.b16 %v871
  %v7151 = vunpack.c.l.b16 %v872
  %v7152 = vunpack.c.l.b16 %v873
  %v7153 = vunpack.c.l.b16 %v874
  %v7154 = vunpack.c.l.b16 %v875
  %v7155 = vunpack.c.l.b16 %v876
  %v7156 = vunpack.c.l.b16 %v877
  %v7157 = vunpack.c.l.b16 %v878
  %v7158 = vunpack.c.l.b16 %v879
  %v7159 = vunpack.c.l.b16 %v880
  %v7160 = vunpack.c.l.b16 %v881
  %v7161 = vunpack.c.l.b16 %v882
  %v7162 = vunpack.c.l.b16 %v883
  %v7163 = vunpack.c.l.b16 %v884
  %v7164 = vunpack.c.l.b16 %v885
  %v7165 = vunpack.c.l.b16 %v886
  %v7166 = vunpack.c.l.b16 %v887
  %v7167 = vunpack.c.l.b16 %v888
  %v7168 = vunpack.c.l.b16 %v889
  %v7169 = vunpack.c.l.b16 %v890
  %v7170 = vunpack.c.l.b16 %v891
  %v7171 = vunpack.c.l.b16 %v892
  %v7172 = vunpack.c.l.b16 %v893
  %v7173 = vunpack.c.l.b16 %v894
  %v7174 = vunpack.c.l.b16 %v895
  %v7175 = vunpack.c.l.b16 %v896
  %v7176 = vunpack.c.l.b16 %v897
  %v7177 = vunpack.c.l.b16 %v898
  %v7178 = vunpack.c.l.b16 %v899
  %v7179 = vunpack.c.l.b16 %v900
  %v7180 = vunpack.c.l.b16 %v901
  %v7181 = vunpack.c.l.b16 %v902
  %v7182 = vunpack.c.l.b16 %v903
  %v7183 = vunpack.c.l.b16 %v904
  %v7184 = vunpack.c.l.b16 %v905
  %v7185 = vunpack.c.l.b16 %v906
  %v7186 = vunpack.c.l.b16 %v907
  %v7187 = vunpack.c.l.b16 %v908
  %v7188 = vunpack.c.l.b16 %v909
  %v7189 = vunpack.c.l.b16 %v910
  %v7190 = vunpack.c.l.b16 %v911
  %v7191 = vunpack.c.l.b16 %v912
  %v7192 = vunpack.c.l.b16 %v913
  %v7193 = vunpack.c.l.b16 %v914
  %v7194 = vunpack.c.l.b16 %v915
  %v7195 = vunpack.c.l.b16 %v916
  %v7196 = vunpack.c.l.b16 %v917
  %v7197 = vunpack.c.l.b16 %v918
  %v7198 = vunpack.c.l.b16 %v919
  %v7199 = vunpack.c.l.b16 %v920
  %v7200 = vunpack.c.l.b16 %v921
  %v7201 = vunpack.c.l.b16 %v922
  %v7202 = vunpack.c.l.b16 %v923
  %v7203 = vunpack.c.l.b16 %v924
  %v7204 = vunpack.c.l.b16 %v925
  %v7205 = vunpack.c.l.b16 %v926
  %v7206 = vunpack.c.l.b16 %v927
  %v7207 = vunpack.c.l.b16 %v928
  %v7208 = vunpack.c.l.b16 %v929
  %v7209 = vunpack.c.l.b16 %v930
  %v7210 = vunpack.c.l.b16 %v931
  %v7211 = vunpack.c.l.b16 %v932
  %v7212 = vunpack.c.l.b16 %v933
  %v7213 = vunpack.c.l.b16 %v934
  %v7214 = vunpack.c.l.b16 %v935
  %v7215 = vunpack.c.l.b16 %v936
  %v7216 = vunpack.c.l.b16 %v937
  %v7217 = vunpack.c.l.b16 %v938
  %v7218 = vunpack.c.l.b16 %v939
  %v7219 = vunpack.c.l.b16 %v940
  %v7220 = vunpack.c.l.b16 %v941
  %v7221 = vunpack.c.l.b16 %v942
  %v7222 = vunpack.c.l.b16 %v943
  %v7223 = vunpack.c.l.b16 %v944
  %v7224 = vunpack.c.l.b16 %v945
  %v7225 = vunpack.c.l.b16 %v946
  %v7226 = vunpack.c.l.b16 %v947
  %v7227 = vunpack.c.l.b16 %v948
  %v7228 = vunpack.c.l.b16 %v949
  %v7229 = vunpack.c.l.b16 %v950
  %v7230 = vunpack.c.l.b16 %v951
  %v7231 = vunpack.c.l.b16 %v952
  %v7232 = vunpack.c.l.b16 %v953
  %v7233 = vunpack.c.l.b16 %v954
  %v7234 = vunpack.c.l.b16 %v955
  %v7235 = vunpack.c.l.b16 %v956
  %v7236 = vunpack.c.l.b16 %v957
  %v7237 = vunpack.c.l.b16 %v958
  %v7238 = vunpack.c.l.b16 %v959
  %v7239 = vunpack.c.l.b16 %v960
  %v7240 = vunpack.c.l.b16 %v961
  %v7241 = vunpack.c.l.b16 %v962
  %v7242 = vunpack.c.l.b16 %v963
  %v7243 = vunpack.c.l.b16 %v964
  %v7244 = vunpack.c.l.b16 %v965
  %v7245 = vunpack.c.l.b16 %v966
  %v7246 = vunpack.c.l.b16 %v967
  %v7247 = vunpack.c.l.b16 %v968
  %v7248 = vunpack.c.l.b16 %v969
  %v7249 = vunpack.c.l.b16 %v970
  %v7250 = vunpack.c.l.b16 %v971
  %v7251 = vunpack.c.l.b16 %v972
  %v7252 = vunpack.c.l.b16 %v973
  %v7253 = vunpack.c.l.b16 %v974
  %v7254 = vunpack.c.l.b16 %v975
  %v7255 = vunpack.c.l.b16 %v976
  %v7256 = vunpack.c.l.b16 %v977
  %v7257 = vunpack.c.l.b16 %v978
  %v7258 = vunpack.c.l.b16 %v979
  %v7259 = vunpack.c.l.b16 %v980
  %v7260 = vunpack.c.l.b16 %v981
  %v7261 = vunpack.c.l.b16 %v982
  %v7262 = vunpack.c.l.b16 %v983
  %v7263 = vunpack.c.l.b16 %v984
  %v7264 = vunpack.c.l.b16 %v985
  %v7265 = vunpack.c.l.b16 %v986
  %v7266 = vunpack.c.l.b16 %v987
  %v7267 = vunpack.c.l.b16 %v988
  %v7268 = vunpack.c.l.b16 %v989
  %v7269 = vunpack.c.l.b16 %v990
  %v7270 = vunpack.c.l.b16 %v991
  %v7271 = vunpack.c.l.b16 %v992
  %v7272 = vunpack.c.l.b16 %v993
  %v7273 = vunpack.c.l.b16 %v994
  %v7274 = vunpack.c.l.b16 %v995
  %v7275 = vunpack.c.l.b16 %v996
  %v7276 = vunpack.c.l.b16 %v997
  %v7277 = vunpack.c.l.b16 %v998
  %v7278 = vunpack.c.l.b16 %v999
  %v7279 = vunpack.c.l.b16 %v1000
  %v7280 = vunpack.c.l.b16 %v1001
  %v7281 = vunpack.c.l.b16 %v1002
  %v7282 = vunpack.c.l.b16 %v1003
  %v7283 = vunpack.c.l.b16 %v1004
  %v7284 = vunpack.c.l.b16 %v1005
  %v7285 = vunpack.c.l.b16 %v1006
  %v7286 = vunpack.c.l.b16 %v1007
  %v7287 = vunpack.c.l.b16 %v1008
  %v7288 = vunpack.c.l.b16 %v1009
  %v7289 = vunpack.c.l.b16 %v1010
  %v7290 = vunpack.c.l.b16 %v1011
  %v7291 = vunpack.c.l.b16 %v1012
  %v7292 = vunpack.c.l.b16 %v1013
  %v7293 = vunpack.c.l.b16 %v1014
  %v7294 = vunpack.c.l.b16 %v1015
  %v7295 = vunpack.c.l.b16 %v1016
  %v7296 = vunpack.c.l.b16 %v1017
  %v7297 = vunpack.c.l.b16 %v1018
  %v7298 = vunpack.c.l.b16 %v1019
  %v7299 = vunpack.c.l.b16 %v1020
  %v7300 = vunpack.c.l.b16 %v1021
  %v7301 = vunpack.c.l.b16 %v1022
  %v7302 = vunpack.c.l.b16 %v1023
  %v7303 = vunpack.c.l.b16 %v1024
  %v7304 = vunpack.c.l.b16 %v1025
  %v7305 = vunpack.c.l.b16 %v1026
  %v7306 = vunpack.c.l.b16 %v1027
  %v7307 = vunpack.c.l.b16 %v1028
  %v7308 = vunpack.c.l.b16 %v1029
  %v7309 = vunpack.c.l.b16 %v1030
  %v7310 = vunpack.c.l.b16 %v1031
  %v7311 = vunpack.c.l.b16 %v1032
  %v7312 = vunpack.c.l.b16 %v1033
  %v7313 = vunpack.c.l.b16 %v1034
  %v7314 = vunpack.c.l.b16 %v1035
  %v7315 = vunpack.c.l.b16 %v1036
  %v7316 = vunpack.c.l.b16 %v1037
  %v7317 = vunpack.c.l.b16 %v1038
  %v7318 = vunpack.c.l.b16 %v1039
  %v7319 = vunpack.c.l.b16 %v1040
  %v7320 = vunpack.c.l.b16 %v1041
  %v7321 = vunpack.c.l.b16 %v1042
  %v7322 = vunpack.c.l.b16 %v1043
  %v7323 = vunpack.c.l.b16 %v1044
  %v7324 = vunpack.c.l.b16 %v1045
  %v7325 = vunpack.c.l.b16 %v1046
  %v7326 = vunpack.c.l.b16 %v1047
  %v7327 = vunpack.c.l.b16 %v1048
  %v7328 = vunpack.c.l.b16 %v1049
  %v7329 = vunpack.c.l.b16 %v1050
  %v7330 = vunpack.c.l.b16 %v1051
  %v7331 = vunpack.c.l.b16 %v1052
  %v7332 = vunpack.c.l.b16 %v1053
  %v7333 = vunpack.c.l.b16 %v1054
  %v7334 = vunpack.c.l.b16 %v1055
  %v7335 = vunpack.c.l.b16 %v1056
  %v7336 = vunpack.c.l.b16 %v1057
  %v7337 = vunpack.c.l.b16 %v1058
  %v7338 = vunpack.c.l.b16 %v1059
  %v7339 = vunpack.c.l.b16 %v1060
  %v7340 = vunpack.c.l.b16 %v1061
  %v7341 = vunpack.c.l.b16 %v1062
  %v7342 = vunpack.c.l.b16 %v1063
  %v7343 = vunpack.c.l.b16 %v1064
  %v7344 = vunpack.c.l.b16 %v1065
  %v7345 = vunpack.c.l.b16 %v1066
  %v7346 = vunpack.c.l.b16 %v1067
  %v7347 = vunpack.c.l.b16 %v1068
  %v7348 = vunpack.c.l.b16 %v1069
  %v7349 = vunpack.c.l.b16 %v1070
  %v7350 = vunpack.c.l.b16 %v1071
  %v7351 = vunpack.c.l.b16 %v1072
  %v7352 = vunpack.c.l.b16 %v1073
  %v7353 = vunpack.c.l.b16 %v1074
  %v7354 = vunpack.c.l.b16 %v1075
  %v7355 = vunpack.c.l.b16 %v1076
  %v7356 = vunpack.c.l.b16 %v1077
  %v7357 = vunpack.c.l.b16 %v1078
  %v7358 = vunpack.c.l.b16 %v1079
  %v7359 = vunpack.c.l.b16 %v1080
  %v7360 = vunpack.c.l.b16 %v1081
  %v7361 = vunpack.c.l.b16 %v1082
  %v7362 = vunpack.c.l.b16 %v1083
  %v7363 = vunpack.c.l.b16 %v1084
  %v7364 = vunpack.c.l.b16 %v1085
  %v7365 = vunpack.c.l.b16 %v1086
  %v7366 = vunpack.c.l.b16 %v1087
  %v7367 = vunpack.c.l.b16 %v1088
  %v7368 = vunpack.c.l.b16 %v1089
  %v7369 = vunpack.c.l.b16 %v1090
  %v7370 = vunpack.c.l.b16 %v1091
  %v7371 = vunpack.c.l.b16 %v1092
  %v7372 = vunpack.c.l.b16 %v1093
  %v7373 = vunpack.c.l.b16 %v1094
  %v7374 = vunpack.c.l.b16 %v1095
  %v7375 = vunpack.c.l.b16 %v1096
  %v7376 = vunpack.c.l.b16 %v1097
  %v7377 = vunpack.c.l.b16 %v1098
  %v7378 = vunpack.c.l.b16 %v1099
  %v7379 = vunpack.c.l.b16 %v1100
  %v7380 = vunpack.c.l.b16 %v1101
  %v7381 = vunpack.c.l.b16 %v1102
  %v7382 = vunpack.c.l.b16 %v1103
  %v7383 = vunpack.c.l.b16 %v1104
  %v7384 = vunpack.c.l.b16 %v1105
  %v7385 = vunpack.c.l.b16 %v1106
  %v7386 = vunpack.c.l.b16 %v1107
  %v7387 = vunpack.c.l.b16 %v1108
  %v7388 = vunpack.c.l.b16 %v1109
  %v7389 = vunpack.c.l.b16 %v1110
  %v7390 = vunpack.c.l.b16 %v1111
  %v7391 = vunpack.c.l.b16 %v1112
  %v7392 = vunpack.c.l.b16 %v1113
  %v7393 = vunpack.c.l.b16 %v1114
  %v7394 = vunpack.c.l.b16 %v1115
  %v7395 = vunpack.c.l.b16 %v1116
  %v7396 = vunpack.c.l.b16 %v1117
  %v7397 = vunpack.c.l.b16 %v1118
  %v7398 = vunpack.c.l.b16 %v1119
  %v7399 = vunpack.c.l.b16 %v1120
  %v7400 = vunpack.c.l.b16 %v1121
  %v7401 = vunpack.c.l.b16 %v1122
  %v7402 = vunpack.c.l.b16 %v1123
  %v7403 = vunpack.c.l.b16 %v1124
  %v7404 = vunpack.c.l.b16 %v1125
  %v7405 = vunpack.c.l.b16 %v1126
  %v7406 = vunpack.c.l.b16 %v1127
  %v7407 = vunpack.c.l.b16 %v1128
  %v7408 = vunpack.c.l.b16 %v1129
  %v7409 = vunpack.c.l.b16 %v1130
  %v7410 = vunpack.c.l.b16 %v1131
  %v7411 = vunpack.c.l.b16 %v1132
  %v7412 = vunpack.c.l.b16 %v1133
  %v7413 = vunpack.c.l.b16 %v1134
  %v7414 = vunpack.c.l.b16 %v1135
  %v7415 = vunpack.c.l.b16 %v1136
  %v7416 = vunpack.c.l.b16 %v1137
  %v7417 = vunpack.c.l.b16 %v1138
  %v7418 = vunpack.c.l.b16 %v1139
  %v7419 = vunpack.c.l.b16 %v1140
  %v7420 = vunpack.c.l.b16 %v1141
  %v7421 = vunpack.c.l.b16 %v1142
  %v7422 = vunpack.c.l.b16 %v1143
  %v7423 = vunpack.c.l.b16 %v1144
  %v7424 = vunpack.c.l.b16 %v1145
  %v7425 = vunpack.c.l.b16 %v1146
  %v7426 = vunpack.c.l.b16 %v1147
  %v7427 = vunpack.c.l.b16 %v1148
  %v7428 = vunpack.c.l.b16 %v1149
  %v7429 = vunpack.c.l.b16 %v1150
  %v7430 = vunpack.c.l.b16 %v1151
  %v7431 = vunpack.c.l.b16 %v1152
  %v7432 = vunpack.c.l.b16 %v1153
  %v7433 = vunpack.c.l.b16 %v1154
  %v7434 = vunpack.c.l.b16 %v1155
  %v7435 = vunpack.c.l.b16 %v1156
  %v7436 = vunpack.c.l.b16 %v1157
  %v7437 = vunpack.c.l.b16 %v1158
  %v7438 = vunpack.c.l.b16 %v1159
  %v7439 = vunpack.c.l.b16 %v1160
  %v7440 = vunpack.c.l.b16 %v1161
  %v7441 = vunpack.c.l.b16 %v1162
  %v7442 = vunpack.c.l.b16 %v1163
  %v7443 = vunpack.c.l.b16 %v1164
  %v7444 = vunpack.c.l.b16 %v1165
  %v7445 = vunpack.c.l.b16 %v1166
  %v7446 = vunpack.c.l.b16 %v1167
  %v7447 = vunpack.c.l.b16 %v1168
  %v7448 = vunpack.c.l.b16 %v1169
  %v7449 = vunpack.c.l.b16 %v1170
  %v7450 = vunpack.c.l.b16 %v1171
  %v7451 = vunpack.c.l.b16 %v1172
  %v7452 = vunpack.c.l.b16 %v1173
  %v7453 = vunpack.c.l.b16 %v1174
  %v7454 = vunpack.c.l.b16 %v1175
  %v7455 = vunpack.c.l.b16 %v1176
  %v7456 = vunpack.c.l.b16 %v1177
  %v7457 = vunpack.c.l.b16 %v1178
  %v7458 = vunpack.c.l.b16 %v1179
  %v7459 = vunpack.c.l.b16 %v1180
  %v7460 = vunpack.c.l.b16 %v1181
  %v7461 = vunpack.c.l.b16 %v1182
  %v7462 = vunpack.c.l.b16 %v1183
  %v7463 = vunpack.c.l.b16 %v1184
  %v7464 = vunpack.c.l.b16 %v1185
  %v7465 = vunpack.c.l.b16 %v1186
  %v7466 = vunpack.c.l.b16 %v1187
  %v7467 = vunpack.c.l.b16 %v1188
  %v7468 = vunpack.c.l.b16 %v1189
  %v7469 = vunpack.c.l.b16 %v1190
  %v7470 = vunpack.c.l.b16 %v1191
  %v7471 = vunpack.c.l.b16 %v1192
  %v7472 = vunpack.c.l.b16 %v1193
  %v7473 = vunpack.c.l.b16 %v1194
  %v7474 = vunpack.c.l.b16 %v1195
  %v7475 = vunpack.c.l.b16 %v1196
  %v7476 = vunpack.c.l.b16 %v1197
  %v7477 = vunpack.c.l.b16 %v1198
  %v7478 = vunpack.c.l.b16 %v1199
  %v7479 = vunpack.c.l.b16 %v1200
  %v7480 = vunpack.c.l.b16 %v1201
  %v7481 = vunpack.c.l.b16 %v1202
  %v7482 = vunpack.c.l.b16 %v1203
  %v7483 = vunpack.c.l.b16 %v1204
  %v7484 = vunpack.c.l.b16 %v1205
  %v7485 = vunpack.c.l.b16 %v1206
  %v7486 = vunpack.c.l.b16 %v1207
  %v7487 = vunpack.c.l.b16 %v1208
  %v7488 = vunpack.c.l.b16 %v1209
  %v7489 = vunpack.c.l.b16 %v1210
  %v7490 = vunpack.c.l.b16 %v1211
  %v7491 = vunpack.c.l.b16 %v1212
  %v7492 = vunpack.c.l.b16 %v1213
  %v7493 = vunpack.c.l.b16 %v1214
  %v7494 = vunpack.c.l.b16 %v1215
  %v7495 = vunpack.c.l.b16 %v1216
  %v7496 = vunpack.c.l.b16 %v1217
  %v7497 = vunpack.c.l.b16 %v1218
  %v7498 = vunpack.c.l.b16 %v1219
  %v7499 = vunpack.c.l.b16 %v1220
  %v7500 = vunpack.c.l.b16 %v1221
  %v7501 = vunpack.c.l.b16 %v1222
  %v7502 = vunpack.c.l.b16 %v1223
  %v7503 = vunpack.c.l.b16 %v1224
  %v7504 = vunpack.c.l.b16 %v1225
  %v7505 = vunpack.c.l.b16 %v1226
  %v7506 = vunpack.c.l.b16 %v1227
  %v7507 = vunpack.c.l.b16 %v1228
  %v7508 = vunpack.c.l.b16 %v1229
  %v7509 = vunpack.c.l.b16 %v1230
  %v7510 = vunpack.c.l.b16 %v1231
  %v7511 = vunpack.c.l.b16 %v1232
  %v7512 = vunpack.c.l.b16 %v1233
  %v7513 = vunpack.c.l.b16 %v1234
  %v7514 = vunpack.c.l.b16 %v1235
  %v7515 = vunpack.c.l.b16 %v1236
  %v7516 = vunpack.c.l.b16 %v1237
  %v7517 = vunpack.c.l.b16 %v1238
  %v7518 = vunpack.c.l.b16 %v1239
  %v7519 = vunpack.c.l.b16 %v1240
  %v7520 = vunpack.c.l.b16 %v1241
  %v7521 = vunpack.c.l.b16 %v1242
  %v7522 = vunpack.c.l.b16 %v1243
  %v7523 = vunpack.c.l.b16 %v1244
  %v7524 = vunpack.c.l.b16 %v1245
  %v7525 = vunpack.c.l.b16 %v1246
  %v7526 = vunpack.c.l.b16 %v1247
  %v7527 = vunpack.c.l.b16 %v1248
  %v7528 = vunpack.c.l.b16 %v1249
  %v7529 = vunpack.c.l.b16 %v1250
  %v7530 = vunpack.c.l.b16 %v1251
  %v7531 = vunpack.c.l.b16 %v1252
  %v7532 = vunpack.c.l.b16 %v1253
  %v7533 = vunpack.c.l.b16 %v1254
  %v7534 = vunpack.c.l.b16 %v1255
  %v7535 = vunpack.c.l.b16 %v1256
  %v7536 = vunpack.c.l.b16 %v1257
  %v7537 = vunpack.c.l.b16 %v1258
  %v7538 = vunpack.c.l.b16 %v1259
  %v7539 = vunpack.c.l.b16 %v1260
  %v7540 = vunpack.c.l.b16 %v1261
  %v7541 = vunpack.c.l.b16 %v1262
  %v7542 = vunpack.c.l.b16 %v1263
  %v7543 = vunpack.c.l.b16 %v1264
  %v7544 = vunpack.c.l.b16 %v1265
  %v7545 = vunpack.c.l.b16 %v1266
  %v7546 = vunpack.c.l.b16 %v1267
  %v7547 = vunpack.c.l.b16 %v1268
  %v7548 = vunpack.c.l.b16 %v1269
  %v7549 = vunpack.c.l.b16 %v1270
  %v7550 = vunpack.c.l.b16 %v1271
  %v7551 = vunpack.c.l.b16 %v1272
  %v7552 = vunpack.c.l.b16 %v1273
  %v7553 = vunpack.c.l.b16 %v1274
  %v7554 = vunpack.c.l.b16 %v1275
  %v7555 = vunpack.c.l.b16 %v1276
  %v7556 = vunpack.c.l.b16 %v1277
  %v7557 = vunpack.c.l.b16 %v1278
  %v7558 = vunpack.c.l.b16 %v1279
  %v7559 = vunpack.c.l.b16 %v1280
  %v7560 = vunpack.c.l.b16 %v1281
  %v7561 = vunpack.c.l.b16 %v1282
  %v7562 = vunpack.c.l.b16 %v1283
  %v7563 = vunpack.c.l.b16 %v1284
  %v7564 = vunpack.c.l.b16 %v1285
  %v7565 = vunpack.c.l.b16 %v1286
  %v7566 = vunpack.c.l.b16 %v1287
  %v7567 = vunpack.c.l.b16 %v1288
  %v7568 = vunpack.c.l.b16 %v1289
  %v7569 = vunpack.c.l.b16 %v1290
  %v7570 = vunpack.c.l.b16 %v1291
  %v7571 = vunpack.c.l.b16 %v1292
  %v7572 = vunpack.c.l.b16 %v1293
  %v7573 = vunpack.c.l.b16 %v1294
  %v7574 = vunpack.c.l.b16 %v1295
  %v7575 = vunpack.c.l.b16 %v1296
  %v7576 = vunpack.c.l.b16 %v1297
  %v7577 = vunpack.c.l.b16 %v1298
  %v7578 = vunpack.c.l.b16 %v1299
  %v7579 = vunpack.c.l.b16 %v1300
  %v7580 = vunpack.c.l.b16 %v1301
  %v7581 = vunpack.c.l.b16 %v1302
  %v7582 = vunpack.c.l.b16 %v1303
  %v7583 = vunpack.c.l.b16 %v1304
  %v7584 = vunpack.c.l.b16 %v1305
  %v7585 = vunpack.c.l.b16 %v1306
  %v7586 = vunpack.c.l.b16 %v1307
  %v7587 = vunpack.c.l.b16 %v1308
  %v7588 = vunpack.c.l.b16 %v1309
  %v7589 = vunpack.c.l.b16 %v1310
  %v7590 = vunpack.c.l.b16 %v1311
  %v7591 = vunpack.c.l.b16 %v1312
  %v7592 = vunpack.c.l.b16 %v1313
  %v7593 = vunpack.c.l.b16 %v1314
  %v7594 = vunpack.c.l.b16 %v1315
  %v7595 = vunpack.c.l.b16 %v1316
  %v7596 = vunpack.c.l.b16 %v1317
  %v7597 = vunpack.c.l.b16 %v1318
  %v7598 = vunpack.c.l.b16 %v1319
  %v7599 = vunpack.c.l.b16 %v1320
  %v7600 = vunpack.c.l.b16 %v1321
  %v7601 = vunpack.c.l.b16 %v1322
  %v7602 = vunpack.c.l.b16 %v1323
  %v7603 = vunpack.c.l.b16 %v1324
  %v7604 = vunpack.c.l.b16 %v1325
  %v7605 = vunpack.c.l.b16 %v1326
  %v7606 = vunpack.c.l.b16 %v1327
  %v7607 = vunpack.c.l.b16 %v1328
  %v7608 = vunpack.c.l.b16 %v1329
  %v7609 = vunpack.c.l.b16 %v1330
  %v7610 = vunpack.c.l.b16 %v1331
  %v7611 = vunpack.c.l.b16 %v1332
  %v7612 = vunpack.c.l.b16 %v1333
  %v7613 = vunpack.c.l.b16 %v1334
  %v7614 = vunpack.c.l.b16 %v1335
  %v7615 = vunpack.c.l.b16 %v1336
  %v7616 = vunpack.c.l.b16 %v1337
  %v7617 = vunpack.c.l.b16 %v1338
  %v7618 = vunpack.c.l.b16 %v1339
  %v7619 = vunpack.c.l.b16 %v1340
  %v7620 = vunpack.c.l.b16 %v1341
  %v7621 = vunpack.c.l.b16 %v1342
  %v7622 = vunpack.c.l.b16 %v1343
  %v7623 = vunpack.c.l.b16 %v1344
  %v7624 = vunpack.c.l.b16 %v1345
  %v7625 = vunpack.c.l.b16 %v1346
  %v7626 = vunpack.c.l.b16 %v1347
  %v7627 = vunpack.c.l.b16 %v1348
  %v7628 = vunpack.c.l.b16 %v1349
  %v7629 = vunpack.c.l.b16 %v1350
  %v7630 = vunpack.c.l.b16 %v1351
  %v7631 = vunpack.c.l.b16 %v1352
  %v7632 = vunpack.c.l.b16 %v1353
  %v7633 = vunpack.c.l.b16 %v1354
  %v7634 = vunpack.c.l.b16 %v1355
  %v7635 = vunpack.c.l.b16 %v1356
  %v7636 = vunpack.c.l.b16 %v1357
  %v7637 = vunpack.c.l.b16 %v1358
  %v7638 = vunpack.c.l.b16 %v1359
  %v7639 = vunpack.c.l.b16 %v1360
  %v7640 = vunpack.c.l.b16 %v1361
  %v7641 = vunpack.c.l.b16 %v1362
  %v7642 = vunpack.c.l.b16 %v1363
  %v7643 = vunpack.c.l.b16 %v1364
  %v7644 = vunpack.c.l.b16 %v1365
  %v7645 = vunpack.c.l.b16 %v1366
  %v7646 = vunpack.c.l.b16 %v1367
  %v7647 = vunpack.c.l.b16 %v1368
  %v7648 = vunpack.c.l.b16 %v1369
  %v7649 = vunpack.c.l.b16 %v1370
  %v7650 = vunpack.c.l.b16 %v1371
  %v7651 = vunpack.c.l.b16 %v1372
  %v7652 = vunpack.c.l.b16 %v1373
  %v7653 = vunpack.c.l.b16 %v1374
  %v7654 = vunpack.c.l.b16 %v1375
  %v7655 = vunpack.c.l.b16 %v1376
  %v7656 = vunpack.c.l.b16 %v1377
  %v7657 = vunpack.c.l.b16 %v1378
  %v7658 = vunpack.c.l.b16 %v1379
  %v7659 = vunpack.c.l.b16 %v1380
  %v7660 = vunpack.c.l.b16 %v1381
  %v7661 = vunpack.c.l.b16 %v1382
  %v7662 = vunpack.c.l.b16 %v1383
  %v7663 = vunpack.c.l.b16 %v1384
  %v7664 = vunpack.c.l.b16 %v1385
  %v7665 = vunpack.c.l.b16 %v1386
  %v7666 = vunpack.c.l.b16 %v1387
  %v7667 = vunpack.c.l.b16 %v1388
  %v7668 = vunpack.c.l.b16 %v1389
  %v7669 = vunpack.c.l.b16 %v1390
  %v7670 = vunpack.c.l.b16 %v1391
  %v7671 = vunpack.c.l.b16 %v1392
  %v7672 = vunpack.c.l.b16 %v1393
  %v7673 = vunpack.c.l.b16 %v1394
  %v7674 = vunpack.c.l.b16 %v1395
  %v7675 = vunpack.c.l.b16 %v1396
  %v7676 = vunpack.c.l.b16 %v1397
  %v7677 = vunpack.c.l.b16 %v1398
  %v7678 = vunpack.c.l.b16 %v1399
  %v7679 = vunpack.c.l.b16 %v1400
  %v7680 = vunpack.c.l.b16 %v1401
  %v7681 = vunpack.c.l.b16 %v1402
  %v7682 = vunpack.c.l.b16 %v1403
  %v7683 = vunpack.c.l.b16 %v1404
  %v7684 = vunpack.c.l.b16 %v1405
  %v7685 = vunpack.c.l.b16 %v1406
  %v7686 = vunpack.c.l.b16 %v1407
  %v7687 = vunpack.c.l.b16 %v1408
  %v7688 = vunpack.c.l.b16 %v1409
  %v7689 = vunpack.c.l.b16 %v1410
  %v7690 = vunpack.c.l.b16 %v1411
  %v7691 = vunpack.c.l.b16 %v1412
  %v7692 = vunpack.c.l.b16 %v1413
  %v7693 = vunpack.c.l.b16 %v1414
  %v7694 = vunpack.c.l.b16 %v1415
  %v7695 = vunpack.c.l.b16 %v1416
  %v7696 = vunpack.c.l.b16 %v1417
  %v7697 = vunpack.c.l.b16 %v1418
  %v7698 = vunpack.c.l.b16 %v1419
  %v7699 = vunpack.c.l.b16 %v1420
  %v7700 = vunpack.c.l.b16 %v1421
  %v7701 = vunpack.c.l.b16 %v1422
  %v7702 = vunpack.c.l.b16 %v1423
  %v7703 = vunpack.c.l.b16 %v1424
  %v7704 = vunpack.c.l.b16 %v1425
  %v7705 = vunpack.c.l.b16 %v1426
  %v7706 = vunpack.c.l.b16 %v1427
  %v7707 = vunpack.c.l.b16 %v1428
  %v7708 = vunpack.c.l.b16 %v1429
  %v7709 = vunpack.c.l.b16 %v1430
  %v7710 = vunpack.c.l.b16 %v1431
  %v7711 = vunpack.c.l.b16 %v1432
  %v7712 = vunpack.c.l.b16 %v1433
  %v7713 = vunpack.c.l.b16 %v1434
  %v7714 = vunpack.c.l.b16 %v1435
  %v7715 = vunpack.c.l.b16 %v1436
  %v7716 = vunpack.c.l.b16 %v1437
  %v7717 = vunpack.c.l.b16 %v1438
  %v7718 = vunpack.c.l.b16 %v1439
  %v7719 = vunpack.c.l.b16 %v1440
  %v7720 = vunpack.c.l.b16 %v1441
  %v7721 = vunpack.c.l.b16 %v1442
  %v7722 = vunpack.c.l.b16 %v1443
  %v7723 = vunpack.c.l.b16 %v1444
  %v7724 = vunpack.c.l.b16 %v1445
  %v7725 = vunpack.c.l.b16 %v1446
  %v7726 = vunpack.c.l.b16 %v1447
  %v7727 = vunpack.c.l.b16 %v1448
  %v7728 = vunpack.c.l.b16 %v1449
  %v7729 = vunpack.c.l.b16 %v1450
  %v7730 = vunpack.c.l.b16 %v1451
  %v7731 = vunpack.c.l.b16 %v1452
  %v7732 = vunpack.c.l.b16 %v1453
  %v7733 = vunpack.c.l.b16 %v1454
  %v7734 = vunpack.c.l.b16 %v1455
  %v7735 = vunpack.c.l.b16 %v1456
  %v7736 = vunpack.c.l.b16 %v1457
  %v7737 = vunpack.c.l.b16 %v1458
  %v7738 = vunpack.c.l.b16 %v1459
  %v7739 = vunpack.c.l.b16 %v1460
  %v7740 = vunpack.c.l.b16 %v1461
  %v7741 = vunpack.c.l.b16 %v1462
  %v7742 = vunpack.c.l.b16 %v1463
  %v7743 = vunpack.c.l.b16 %v1464
  %v7744 = vunpack.c.l.b16 %v1465
  %v7745 = vunpack.c.l.b16 %v1466
  %v7746 = vunpack.c.l.b16 %v1467
  %v7747 = vunpack.c.l.b16 %v1468
  %v7748 = vunpack.c.l.b16 %v1469
  %v7749 = vunpack.c.l.b16 %v1470
  %v7750 = vunpack.c.l.b16 %v1471
  %v7751 = vunpack.c.l.b16 %v1472
  %v7752 = vunpack.c.l.b16 %v1473
  %v7753 = vunpack.c.l.b16 %v1474
  %v7754 = vunpack.c.l.b16 %v1475
  %v7755 = vunpack.c.l.b16 %v1476
  %v7756 = vunpack.c.l.b16 %v1477
  %v7757 = vunpack.c.l.b16 %v1478
  %v7758 = vunpack.c.l.b16 %v1479
  %v7759 = vunpack.c.l.b16 %v1480
  %v7760 = vunpack.c.l.b16 %v1481
  %v7761 = vunpack.c.l.b16 %v1482
  %v7762 = vunpack.c.l.b16 %v1483
  %v7763 = vunpack.c.l.b16 %v1484
  %v7764 = vunpack.c.l.b16 %v1485
  %v7765 = vunpack.c.l.b16 %v1486
  %v7766 = vunpack.c.l.b16 %v1487
  %v7767 = vunpack.c.l.b16 %v1488
  %v7768 = vunpack.c.l.b16 %v1489
  %v7769 = vunpack.c.l.b16 %v1490
  %v7770 = vunpack.c.l.b16 %v1491
  %v7771 = vunpack.c.l.b16 %v1492
  %v7772 = vunpack.c.l.b16 %v1493
  %v7773 = vunpack.c.l.b16 %v1494
  %v7774 = vunpack.c.l.b16 %v1495
  %v7775 = vunpack.c.l.b16 %v1496
  %v7776 = vunpack.c.l.b16 %v1497
  %v7777 = vunpack.c.l.b16 %v1498
  %v7778 = vunpack.c.l.b16 %v1499
  %v7779 = vunpack.c.l.b16 %v1500
  %v7780 = vunpack.c.l.b16 %v1501
  %v7781 = vunpack.c.l.b16 %v1502
  %v7782 = vunpack.c.l.b16 %v1503
  %v7783 = vunpack.c.l.b16 %v1504
  %v7784 = vunpack.c.l.b16 %v1505
  %v7785 = vunpack.c.l.b16 %v1506
  %v7786 = vunpack.c.l.b16 %v1507
  %v7787 = vunpack.c.l.b16 %v1508
  %v7788 = vunpack.c.l.b16 %v1509
  %v7789 = vunpack.c.l.b16 %v1510
  %v7790 = vunpack.c.l.b16 %v1511
  %v7791 = vunpack.c.l.b16 %v1512
  %v7792 = vunpack.c.l.b16 %v1513
  %v7793 = vunpack.c.l.b16 %v1514
  %v7794 = vunpack.c.l.b16 %v1515
  %v7795 = vunpack.c.l.b16 %v1516
  %v7796 = vunpack.c.l.b16 %v1517
  %v7797 = vunpack.c.l.b16 %v1518
  %v7798 = vunpack.c.l.b16 %v1519
  %v7799 = vunpack.c.l.b16 %v1520
  %v7800 = vunpack.c.l.b16 %v1521
  %v7801 = vunpack.c.l.b16 %v1522
  %v7802 = vunpack.c.l.b16 %v1523
  %v7803 = vunpack.c.l.b16 %v1524
  %v7804 = vunpack.c.l.b16 %v1525
  %v7805 = vunpack.c.l.b16 %v1526
  %v7806 = vunpack.c.l.b16 %v1527
  %v7807 = vunpack.c.l.b16 %v1528
  %v7808 = vunpack.c.l.b16 %v1529
  %v7809 = vunpack.c.l.b16 %v1530
  %v7810 = vunpack.c.l.b16 %v1531
  %v7811 = vunpack.c.l.b16 %v1532
  %v7812 = vunpack.c.l.b16 %v1533
  %v7813 = vunpack.c.l.b16 %v1534
  %v7814 = vunpack.c.l.b16 %v1535
  %v7815 = vunpack.c.l.b16 %v1536
  %v7816 = vunpack.c.l.b16 %v1537
  %v7817 = vunpack.c.l.b16 %v1538
  %v7818 = vunpack.c.l.b16 %v1539
  %v7819 = vunpack.c.l.b16 %v1540
  %v7820 = vunpack.c.l.b16 %v1541
  %v7821 = vunpack.c.l.b16 %v1542
  %v7822 = vunpack.c.l.b16 %v1543
  %v7823 = vunpack.c.l.b16 %v1544
  %v7824 = vunpack.c.l.b16 %v1545
  %v7825 = vunpack.c.l.b16 %v1546
  %v7826 = vunpack.c.l.b16 %v1547
  %v7827 = vunpack.c.l.b16 %v1548
  %v7828 = vunpack.c.l.b16 %v1549
  %v7829 = vunpack.c.l.b16 %v1550
  %v7830 = vunpack.c.l.b16 %v1551
  %v7831 = vunpack.c.l.b16 %v1552
  %v7832 = vunpack.c.l.b16 %v1553
  %v7833 = vunpack.c.l.b16 %v1554
  %v7834 = vunpack.c.l.b16 %v1555
  %v7835 = vunpack.c.l.b16 %v1556
  %v7836 = vunpack.c.l.b16 %v1557
  %v7837 = vunpack.c.l.b16 %v1558
  %v7838 = vunpack.c.l.b16 %v1559
  %v7839 = vunpack.c.l.b16 %v1560
  %v7840 = vunpack.c.l.b16 %v1561
  %v7841 = vunpack.c.l.b16 %v1562
  %v7842 = vunpack.c.l.b16 %v1563
  %v7843 = vunpack.c.l.b16 %v1564
  %v7844 = vunpack.c.l.b16 %v1565
  %v7845 = vunpack.c.l.b16 %v1566
  %v7846 = vunpack.c.l.b16 %v1567
  %v7847 = vunpack.c.l.b16 %v1568
  %v7848 = vunpack.c.l.b16 %v1569
  %v7849 = vunpack.c.l.b16 %v1570
  %v7850 = vunpack.c.l.b16 %v1571
  %v7851 = vunpack.c.l.b16 %v1572
  %v7852 = vunpack.c.l.b16 %v1573
  %v7853 = vunpack.c.l.b16 %v1574
  %v7854 = vunpack.c.l.b16 %v1575
  %v7855 = vunpack.c.l.b16 %v1576
  %v7856 = vunpack.c.l.b16 %v1577
  %v7857 = vunpack.c.l.b16 %v1578
  %v7858 = vunpack.c.l.b16 %v1579
  %v7859 = vunpack.c.l.b16 %v1580
  %v7860 = vunpack.c.l.b16 %v1581
  %v7861 = vunpack.c.l.b16 %v1582
  %v7862 = vunpack.c.l.b16 %v1583
  %v7863 = vunpack.c.l.b16 %v1584
  %v7864 = vunpack.c.l.b16 %v1585
  %v7865 = vunpack.c.l.b16 %v1586
  %v7866 = vunpack.c.l.b16 %v1587
  %v7867 = vunpack.c.l.b16 %v1588
  %v7868 = vunpack.c.l.b16 %v1589
  %v7869 = vunpack.c.l.b16 %v1590
  %v7870 = vunpack.c.l.b16 %v1591
  %v7871 = vunpack.c.l.b16 %v1592
  %v7872 = vunpack.c.l.b16 %v1593
  %v7873 = vunpack.c.l.b16 %v1594
  %v7874 = vunpack.c.l.b16 %v1595
  %v7875 = vunpack.c.l.b16 %v1596
  %v7876 = vunpack.c.l.b16 %v1597
  %v7877 = vunpack.c.l.b16 %v1598
  %v7878 = vunpack.c.l.b16 %v1599
  %v7879 = vunpack.c.l.b16 %v1600
  %v7880 = vunpack.c.l.b16 %v1601
  %v7881 = vunpack.c.l.b16 %v1602
  %v7882 = vunpack.c.l.b16 %v1603
  %v7883 = vunpack.c.l.b16 %v1604
  %v7884 = vunpack.c.l.b16 %v1605
  %v7885 = vunpack.c.l.b16 %v1606
  %v7886 = vunpack.c.l.b16 %v1607
  %v7887 = vunpack.c.l.b16 %v1608
  %v7888 = vunpack.c.l.b16 %v1609
  %v7889 = vunpack.c.l.b16 %v1610
  %v7890 = vunpack.c.l.b16 %v1611
  %v7891 = vunpack.c.l.b16 %v1612
  %v7892 = vunpack.c.l.b16 %v1613
  %v7893 = vunpack.c.l.b16 %v1614
  %v7894 = vunpack.c.l.b16 %v1615
  %v7895 = vunpack.c.l.b16 %v1616
  %v7896 = vunpack.c.l.b16 %v1617
  %v7897 = vunpack.c.l.b16 %v1618
  %v7898 = vunpack.c.l.b16 %v1619
  %v7899 = vunpack.c.l.b16 %v1620
  %v7900 = vunpack.c.l.b16 %v1621
  %v7901 = vunpack.c.l.b16 %v1622
  %v7902 = vunpack.c.l.b16 %v1623
  %v7903 = vunpack.c.l.b16 %v1624
  %v7904 = vunpack.c.l.b16 %v1625
  %v7905 = vunpack.c.l.b16 %v1626
  %v7906 = vunpack.c.l.b16 %v1627
  %v7907 = vunpack.c.l.b16 %v1628
  %v7908 = vunpack.c.l.b16 %v1629
  %v7909 = vunpack.c.l.b16 %v1630
  %v7910 = vunpack.c.l.b16 %v1631
  %v7911 = vunpack.c.l.b16 %v1632
  %v7912 = vunpack.c.l.b16 %v1633
  %v7913 = vunpack.c.l.b16 %v1634
  %v7914 = vunpack.c.l.b16 %v1635
  %v7915 = vunpack.c.l.b16 %v1636
  %v7916 = vunpack.c.l.b16 %v1637
  %v7917 = vunpack.c.l.b16 %v1638
  %v7918 = vunpack.c.l.b16 %v1639
  %v7919 = vunpack.c.l.b16 %v1640
  %v7920 = vunpack.c.l.b16 %v1641
  %v7921 = vunpack.c.l.b16 %v1642
  %v7922 = vunpack.c.l.b16 %v1643
  %v7923 = vunpack.c.l.b16 %v1644
  %v7924 = vunpack.c.l.b16 %v1645
  %v7925 = vunpack.c.l.b16 %v1646
  %v7926 = vunpack.c.l.b16 %v1647
  %v7927 = vunpack.c.l.b16 %v1648
  %v7928 = vunpack.c.l.b16 %v1649
  %v7929 = vunpack.c.l.b16 %v1650
  %v7930 = vunpack.c.l.b16 %v1651
  %v7931 = vunpack.c.l.b16 %v1652
  %v7932 = vunpack.c.l.b16 %v1653
  %v7933 = vunpack.c.l.b16 %v1654
  %v7934 = vunpack.c.l.b16 %v1655
  %v7935 = vunpack.c.l.b16 %v1656
  %v7936 = vunpack.c.l.b16 %v1657
  %v7937 = vunpack.c.l.b16 %v1658
  %v7938 = vunpack.c.l.b16 %v1659
  %v7939 = vunpack.c.l.b16 %v1660
  %v7940 = vunpack.c.l.b16 %v1661
  %v7941 = vunpack.c.l.b16 %v1662
  %v7942 = vunpack.c.l.b16 %v1663
  %v7943 = vunpack.c.l.b16 %v1664
  %v7944 = vunpack.c.l.b16 %v1665
  %v7945 = vunpack.c.l.b16 %v1666
  %v7946 = vunpack.c.l.b16 %v1667
  %v7947 = vunpack.c.l.b16 %v1668
  %v7948 = vunpack.c.l.b16 %v1669
  %v7949 = vunpack.c.l.b16 %v1670
  %v7950 = vunpack.c.l.b16 %v1671
  %v7951 = vunpack.c.l.b16 %v1672
  %v7952 = vunpack.c.l.b16 %v1673
  %v7953 = vunpack.c.l.b16 %v1674
  %v7954 = vunpack.c.l.b16 %v1675
  %v7955 = vunpack.c.l.b16 %v1676
  %v7956 = vunpack.c.l.b16 %v1677
  %v7957 = vunpack.c.l.b16 %v1678
  %v7958 = vunpack.c.l.b16 %v1679
  %v7959 = vunpack.c.l.b16 %v1680
  %v7960 = vunpack.c.l.b16 %v1681
  %v7961 = vunpack.c.l.b16 %v1682
  %v7962 = vunpack.c.l.b16 %v1683
  %v7963 = vunpack.c.l.b16 %v1684
  %v7964 = vunpack.c.l.b16 %v1685
  %v7965 = vunpack.c.l.b16 %v1686
  %v7966 = vunpack.c.l.b16 %v1687
  %v7967 = vunpack.c.l.b16 %v1688
  %v7968 = vunpack.c.l.b16 %v1689
  %v7969 = vunpack.c.l.b16 %v1690
  %v7970 = vunpack.c.l.b16 %v1691
  %v7971 = vunpack.c.l.b16 %v1692
  %v7972 = vunpack.c.l.b16 %v1693
  %v7973 = vunpack.c.l.b16 %v1694
  %v7974 = vunpack.c.l.b16 %v1695
  %v7975 = vunpack.c.l.b16 %v1696
  %v7976 = vunpack.c.l.b16 %v1697
  %v7977 = vunpack.c.l.b16 %v1698
  %v7978 = vunpack.c.l.b16 %v1699
  %v7979 = vunpack.c.l.b16 %v1700
  %v7980 = vunpack.c.l.b16 %v1701
  %v7981 = vunpack.c.l.b16 %v1702
  %v7982 = vunpack.c.l.b16 %v1703
  %v7983 = vunpack.c.l.b16 %v1704
  %v7984 = vunpack.c.l.b16 %v1705
  %v7985 = vunpack.c.l.b16 %v1706
  %v7986 = vunpack.c.l.b16 %v1707
  %v7987 = vunpack.c.l.b16 %v1708
  %v7988 = vunpack.c.l.b16 %v1709
  %v7989 = vunpack.c.l.b16 %v1710
  %v7990 = vunpack.c.l.b16 %v1711
  %v7991 = vunpack.c.l.b16 %v1712
  %v7992 = vunpack.c.l.b16 %v1713
  %v7993 = vunpack.c.l.b16 %v1714
  %v7994 = vunpack.c.l.b16 %v1715
  %v7995 = vunpack.c.l.b16 %v1716
  %v7996 = vunpack.c.l.b16 %v1717
  %v7997 = vunpack.c.l.b16 %v1718
  %v7998 = vunpack.c.l.b16 %v1719
  %v7999 = vunpack.c.l.b16 %v1720
  %v8000 = vunpack.c.l.b16 %v1721
  %v8001 = vunpack.c.l.b16 %v1722
  %v8002 = vunpack.c.l.b16 %v1723
  %v8003 = vunpack.c.l.b16 %v1724
  %v8004 = vunpack.c.l.b16 %v1725
  %v8005 = vunpack.c.l.b16 %v1726
  %v8006 = vunpack.c.l.b16 %v1727
  %v8007 = vunpack.c.l.b16 %v1728
  %v8008 = vunpack.c.l.b16 %v1729
  %v8009 = vunpack.c.l.b16 %v1730
  %v8010 = vunpack.c.l.b16 %v1731
  %v8011 = vunpack.c.l.b16 %v1732
  %v8012 = vunpack.c.l.b16 %v1733
  %v8013 = vunpack.c.l.b16 %v1734
  %v8014 = vunpack.c.l.b16 %v1735
  %v8015 = vunpack.c.l.b16 %v1736
  %v8016 = vunpack.c.l.b16 %v1737
  %v8017 = vunpack.c.l.b16 %v1738
  %v8018 = vunpack.c.l.b16 %v1739
  %v8019 = vunpack.c.l.b16 %v1740
  %v8020 = vunpack.c.l.b16 %v1741
  %v8021 = vunpack.c.l.b16 %v1742
  %v8022 = vunpack.c.l.b16 %v1743
  %v8023 = vunpack.c.l.b16 %v1744
  %v8024 = vunpack.c.l.b16 %v1745
  %v8025 = vunpack.c.l.b16 %v1746
  %v8026 = vunpack.c.l.b16 %v1747
  %v8027 = vunpack.c.l.b16 %v1748
  %v8028 = vunpack.c.l.b16 %v1749
  %v8029 = vunpack.c.l.b16 %v1750
  %v8030 = vunpack.c.l.b16 %v1751
  %v8031 = vunpack.c.l.b16 %v1752
  %v8032 = vunpack.c.l.b16 %v1753
  %v8033 = vunpack.c.l.b16 %v1754
  %v8034 = vunpack.c.l.b16 %v1755
  %v8035 = vunpack.c.l.b16 %v1756
  %v8036 = vunpack.c.l.b16 %v1757
  %v8037 = vunpack.c.l.b16 %v1758
  %v8038 = vunpack.c.l.b16 %v1759
  %v8039 = vunpack.c.l.b16 %v1760
  %v8040 = vunpack.c.l.b16 %v1761
  %v8041 = vunpack.c.l.b16 %v1762
  %v8042 = vunpack.c.l.b16 %v1763
  %v8043 = vunpack.c.l.b16 %v1764
  %v8044 = vunpack.c.l.b16 %v1765
  %v8045 = vunpack.c.l.b16 %v1766
  %v8046 = vunpack.c.l.b16 %v1767
  %v8047 = vunpack.c.l.b16 %v1768
  %v8048 = vunpack.c.l.b16 %v1769
  %v8049 = vunpack.c.l.b16 %v1770
  %v8050 = vunpack.c.l.b16 %v1771
  %v8051 = vunpack.c.l.b16 %v1772
  %v8052 = vunpack.c.l.b16 %v1773
  %v8053 = vunpack.c.l.b16 %v1774
  %v8054 = vunpack.c.l.b16 %v1775
  %v8055 = vunpack.c.l.b16 %v1776
  %v8056 = vunpack.c.l.b16 %v1777
  %v8057 = vunpack.c.l.b16 %v1778
  %v8058 = vunpack.c.l.b16 %v1779
  %v8059 = vunpack.c.l.b16 %v1780
  %v8060 = vunpack.c.l.b16 %v1781
  %v8061 = vunpack.c.l.b16 %v1782
  %v8062 = vunpack.c.l.b16 %v1783
  %v8063 = vunpack.c.l.b16 %v1784
  %v8064 = vunpack.c.l.b16 %v1785
  %v8065 = vunpack.c.l.b16 %v1786
  %v8066 = vunpack.c.l.b16 %v1787
  %v8067 = vunpack.c.l.b16 %v1788
  %v8068 = vunpack.c.l.b16 %v1789
  %v8069 = vunpack.c.l.b16 %v1790
  %v8070 = vunpack.c.l.b16 %v1791
  %v8071 = vunpack.c.l.b16 %v1792
  %v8072 = vunpack.c.l.b16 %v1793
  %v8073 = vunpack.c.l.b16 %v1794
  %v8074 = vunpack.c.l.b16 %v1795
  %v8075 = vunpack.c.l.b16 %v1796
  %v8076 = vunpack.c.l.b16 %v1797
  %v8077 = vunpack.c.l.b16 %v1798
  %v8078 = vunpack.c.l.b16 %v1799
  %v8079 = vunpack.c.l.b16 %v1800
  %v8080 = vunpack.c.l.b16 %v1801
  %v8081 = vunpack.c.l.b16 %v1802
  %v8082 = vunpack.c.l.b16 %v1803
  %v8083 = vunpack.c.l.b16 %v1804
  %v8084 = vunpack.c.l.b16 %v1805
  %v8085 = vunpack.c.l.b16 %v1806
  %v8086 = vunpack.c.l.b16 %v1807
  %v8087 = vunpack.c.l.b16 %v1808
  %v8088 = vunpack.c.l.b16 %v1809
  %v8089 = vunpack.c.l.b16 %v1810
  %v8090 = vunpack.c.l.b16 %v1811
  %v8091 = vunpack.c.l.b16 %v1812
  %v8092 = vunpack.c.l.b16 %v1813
  %v8093 = vunpack.c.l.b16 %v1814
  %v8094 = vunpack.c.l.b16 %v1815
  %v8095 = vunpack.c.l.b16 %v1816
  %v8096 = vunpack.c.l.b16 %v1817
  %v8097 = vunpack.c.l.b16 %v1818
  %v8098 = vunpack.c.l.b16 %v1819
  %v8099 = vunpack.c.l.b16 %v1820
  %v8100 = vunpack.c.l.b16 %v1821
  %v8101 = vunpack.c.l.b16 %v1822
  %v8102 = vunpack.c.l.b16 %v1823
  %v8103 = vunpack.c.l.b16 %v1824
  %v8104 = vunpack.c.l.b16 %v1825
  %v8105 = vunpack.c.l.b16 %v1826
  %v8106 = vunpack.c.l.b16 %v1827
  %v8107 = vunpack.c.l.b16 %v1828
  %v8108 = vunpack.c.l.b16 %v1829
  %v8109 = vunpack.c.l.b16 %v1830
  %v8110 = vunpack.c.l.b16 %v1831
  %v8111 = vunpack.c.l.b16 %v1832
  %v8112 = vunpack.c.l.b16 %v1833
  %v8113 = vunpack.c.l.b16 %v1834
  %v8114 = vunpack.c.l.b16 %v1835
  %v8115 = vunpack.c.l.b16 %v1836
  %v8116 = vunpack.c.l.b16 %v1837
  %v8117 = vunpack.c.l.b16 %v1838
  %v8118 = vunpack.c.l.b16 %v1839
  %v8119 = vunpack.c.l.b16 %v1840
  %v8120 = vunpack.c.l.b16 %v1841
  %v8121 = vunpack.c.l.b16 %v1842
  %v8122 = vunpack.c.l.b16 %v1843
  %v8123 = vunpack.c.l.b16 %v1844
  %v8124 = vunpack.c.l.b16 %v1845
  %v8125 = vunpack.c.l.b16 %v1846
  %v8126 = vunpack.c.l.b16 %v1847
  %v8127 = vunpack.c.l.b16 %v1848
  %v8128 = vunpack.c.l.b16 %v1849
  %v8129 = vunpack.c.l.b16 %v1850
  %v8130 = vunpack.c.l.b16 %v1851
  %v8131 = vunpack.c.l.b16 %v1852
  %v8132 = vunpack.c.l.b16 %v1853
  %v8133 = vunpack.c.l.b16 %v1854
  %v8134 = vunpack.c.l.b16 %v1855
  %v8135 = vunpack.c.l.b16 %v1856
  %v8136 = vunpack.c.l.b16 %v1857
  %v8137 = vunpack.c.l.b16 %v1858
  %v8138 = vunpack.c.l.b16 %v1859
  %v8139 = vunpack.c.l.b16 %v1860
  %v8140 = vunpack.c.l.b16 %v1861
  %v8141 = vunpack.c.l.b16 %v1862
  %v8142 = vunpack.c.l.b16 %v1863
  %v8143 = vunpack.c.l.b16 %v1864
  %v8144 = vunpack.c.l.b16 %v1865
  %v8145 = vunpack.c.l.b16 %v1866
  %v8146 = vunpack.c.l.b16 %v1867
  %v8147 = vunpack.c.l.b16 %v1868
  %v8148 = vunpack.c.l.b16 %v1869
  %v8149 = vunpack.c.l.b16 %v1870
  %v8150 = vunpack.c.l.b16 %v1871
  %v8151 = vunpack.c.l.b16 %v1872
  %v8152 = vunpack.c.l.b16 %v1873
  %v8153 = vunpack.c.l.b16 %v1874
  %v8154 = vunpack.c.l.b16 %v1875
  %v8155 = vunpack.c.l.b16 %v1876
  %v8156 = vunpack.c.l.b16 %v1877
  %v8157 = vunpack.c.l.b16 %v1878
  %v8158 = vunpack.c.l.b16 %v1879
  %v8159 = vunpack.c.l.b16 %v1880
  %v8160 = vunpack.c.l.b16 %v1881
  %v8161 = vunpack.c.l.b16 %v1882
  %v8162 = vunpack.c.l.b16 %v1883
  %v8163 = vunpack.c.l.b16 %v1884
  %v8164 = vunpack.c.l.b16 %v1885
  %v8165 = vunpack.c.l.b16 %v1886
  %v8166 = vunpack.c.l.b16 %v1887
  %v8167 = vunpack.c.l.b16 %v1888
  %v8168 = vunpack.c.l.b16 %v1889
  %v8169 = vunpack.c.l.b16 %v1890
  %v8170 = vunpack.c.l.b16 %v1891
  %v8171 = vunpack.c.l.b16 %v1892
  %v8172 = vunpack.c.l.b16 %v1893
  %v8173 = vunpack.c.l.b16 %v1894
  %v8174 = vunpack.c.l.b16 %v1895
  %v8175 = vunpack.c.l.b16 %v1896
  %v8176 = vunpack.c.l.b16 %v1897
  %v8177 = vunpack.c.l.b16 %v1898
  %v8178 = vunpack.c.l.b16 %v1899
  %v8179 = vunpack.c.l.b16 %v1900
  %v8180 = vunpack.c.l.b16 %v1901
  %v8181 = vunpack.c.l.b16 %v1902
  %v8182 = vunpack.c.l.b16 %v1903
  %v8183 = vunpack.c.l.b16 %v1904
  %v8184 = vunpack.c.l.b16 %v1905
  %v8185 = vunpack.c.l.b16 %v1906
  %v8186 = vunpack.c.l.b16 %v1907
  %v8187 = vunpack.c.l.b16 %v1908
  %v8188 = vunpack.c.l.b16 %v1909
  %v8189 = vunpack.c.l.b16 %v1910
  %v8190 = vunpack.c.l.b16 %v1911
  %v8191 = vunpack.c.l.b16 %v1912
  %v8192 = vunpack.c.l.b16 %v1913
  %v8193 = vunpack.c.l.b16 %v1914
  %v8194 = vunpack.c.l.b16 %v1915
  %v8195 = vunpack.c.l.b16 %v1916
  %v8196 = vunpack.c.l.b16 %v1917
  %v8197 = vunpack.c.l.b16 %v1918
  %v8198 = vunpack.c.l.b16 %v1919
  %v8199 = vunpack.c.l.b16 %v1920
  %v8200 = vunpack.c.l.b16 %v1921
  %v8201 = vunpack.c.l.b16 %v1922
  %v8202 = vunpack.c.l.b16 %v1923
  %v8203 = vunpack.c.l.b16 %v1924
  %v8204 = vunpack.c.l.b16 %v1925
  %v8205 = vunpack.c.l.b16 %v1926
  %v8206 = vunpack.c.l.b16 %v1927
  %v8207 = vunpack.c.l.b16 %v1928
  %v8208 = vunpack.c.l.b16 %v1929
  %v8209 = vunpack.c.l.b16 %v1930
  %v8210 = vunpack.c.l.b16 %v1931
  %v8211 = vunpack.c.l.b16 %v1932
  %v8212 = vunpack.c.l.b16 %v1933
  %v8213 = vunpack.c.l.b16 %v1934
  %v8214 = vunpack.c.l.b16 %v1935
  %v8215 = vunpack.c.l.b16 %v1936
  %v8216 = vunpack.c.l.b16 %v1937
  %v8217 = vunpack.c.l.b16 %v1938
  %v8218 = vunpack.c.l.b16 %v1939
  %v8219 = vunpack.c.l.b16 %v1940
  %v8220 = vunpack.c.l.b16 %v1941
  %v8221 = vunpack.c.l.b16 %v1942
  %v8222 = vunpack.c.l.b16 %v1943
  %v8223 = vunpack.c.l.b16 %v1944
  %v8224 = vunpack.c.l.b16 %v1945
  %v8225 = vunpack.c.l.b16 %v1946
  %v8226 = vunpack.c.l.b16 %v1947
  %v8227 = vunpack.c.l.b16 %v1948
  %v8228 = vunpack.c.l.b16 %v1949
  %v8229 = vunpack.c.l.b16 %v1950
  %v8230 = vunpack.c.l.b16 %v1951
  %v8231 = vunpack.c.l.b16 %v1952
  %v8232 = vunpack.c.l.b16 %v1953
  %v8233 = vunpack.c.l.b16 %v1954
  %v8234 = vunpack.c.l.b16 %v1955
  %v8235 = vunpack.c.l.b16 %v1956
  %v8236 = vunpack.c.l.b16 %v1957
  %v8237 = vunpack.c.l.b16 %v1958
  %v8238 = vunpack.c.l.b16 %v1959
  %v8239 = vunpack.c.l.b16 %v1960
  %v8240 = vunpack.c.l.b16 %v1961
  %v8241 = vunpack.c.l.b16 %v1962
  %v8242 = vunpack.c.l.b16 %v1963
  %v8243 = vunpack.c.l.b16 %v1964
  %v8244 = vunpack.c.l.b16 %v1965
  %v8245 = vunpack.c.l.b16 %v1966
  %v8246 = vunpack.c.l.b16 %v1967
  %v8247 = vunpack.c.l.b16 %v1968
  %v8248 = vunpack.c.l.b16 %v1969
  %v8249 = vunpack.c.l.b16 %v1970
  %v8250 = vunpack.c.l.b16 %v1971
  %v8251 = vunpack.c.l.b16 %v1972
  %v8252 = vunpack.c.l.b16 %v1973
  %v8253 = vunpack.c.l.b16 %v1974
  %v8254 = vunpack.c.l.b16 %v1975
  %v8255 = vunpack.c.l.b16 %v1976
  %v8256 = vunpack.c.l.b16 %v1977
  %v8257 = vunpack.c.l.b16 %v1978
  %v8258 = vunpack.c.l.b16 %v1979
  %v8259 = vunpack.c.l.b16 %v1980
  %v8260 = vunpack.c.l.b16 %v1981
  %v8261 = vunpack.c.l.b16 %v1982
  %v8262 = vunpack.c.l.b16 %v1983
  %v8263 = vunpack.c.l.b16 %v1984
  %v8264 = vunpack.c.l.b16 %v1985
  %v8265 = vunpack.c.l.b16 %v1986
  %v8266 = vunpack.c.l.b16 %v1987
  %v8267 = vunpack.c.l.b16 %v1988
  %v8268 = vunpack.c.l.b16 %v1989
  %v8269 = vunpack.c.l.b16 %v1990
  %v8270 = vunpack.c.l.b16 %v1991
  %v8271 = vunpack.c.l.b16 %v1992
  %v8272 = vunpack.c.l.b16 %v1993
  %v8273 = vunpack.c.l.b16 %v1994
  %v8274 = vunpack.c.l.b16 %v1995
  %v8275 = vunpack.c.l.b16 %v1996
  %v8276 = vunpack.c.l.b16 %v1997
  %v8277 = vunpack.c.l.b16 %v1998
  %v8278 = vunpack.c.l.b16 %v1999
  %v8279 = vunpack.c.l.b16 %v2000
  %v8280 = vunpack.c.l.b16 %v2001
  %v8281 = vunpack.c.l.b16 %v2002
  %v8282 = vunpack.c.l.b16 %v2003
  %v8283 = vunpack.c.l.b16 %v2004
  %v8284 = vunpack.c.l.b16 %v2005
  %v8285 = vunpack.c.l.b16 %v2006
  %v8286 = vunpack.c.l.b16 %v2007
  %v8287 = vunpack.c.l.b16 %v2008
  %v8288 = vunpack.c.l.b16 %v2009
  %v8289 = vunpack.c.l.b16 %v2010
  %v8290 = vunpack.c.l.b16 %v2011
  %v8291 = vunpack.c.l.b16 %v2012
  %v8292 = vunpack.c.l.b16 %v2013
  %v8293 = vunpack.c.l.b16 %v2014
  %v8294 = vunpack.c.l.b16 %v2015
  %v8295 = vunpack.c.l.b16 %v2016
  %v8296 = vunpack.c.l.b16 %v2017
  %v8297 = vunpack.c.l.b16 %v2018
  %v8298 = vunpack.c.l.b16 %v2019
  %v8299 = vunpack.c.l.b16 %v2020
  %v8300 = vunpack.c.l.b16 %v2021
  %v8301 = vunpack.c.l.b16 %v2022
  %v8302 = vunpack.c.l.b16 %v2023
  %v8303 = vunpack.c.l.b16 %v2024
  %v8304 = vunpack.c.l.b16 %v2025
  %v8305 = vunpack.c.l.b16 %v2026
  %v8306 = vunpack.c.l.b16 %v2027
  %v8307 = vunpack.c.l.b16 %v2028
  %v8308 = vunpack.c.l.b16 %v2029
  %v8309 = vunpack.c.l.b16 %v2030
  %v8310 = vunpack.c.l.b16 %v2031
  %v8311 = vunpack.c.l.b16 %v2032
  %v8312 = vunpack.c.l.b16 %v2033
  %v8313 = vunpack.c.l.b16 %v2034
  %v8314 = vunpack.c.l.b16 %v2035
  %v8315 = vunpack.c.l.b16 %v2036
  %v8316 = vunpack.c.l.b16 %v2037
  %v8317 = vunpack.c.l.b16 %v2038
  %v8318 = vunpack.c.l.b16 %v2039
  %v8319 = vunpack.c.l.b16 %v2040
  %v8320 = vunpack.c.l.b16 %v2041
  %v8321 = vunpack.c.l.b16 %v2042
  %v8322 = vunpack.c.l.b16 %v2043
  %v8323 = vunpack.c.l.b16 %v2044
  %v8324 = vunpack.c.l.b16 %v2045
  %v8325 = vunpack.c.l.b16 %v2046
  %v8326 = vunpack.c.l.b16 %v2047
  %v8327 = vunpack.c.l.b16 %v2048
  %v8328 = vunpack.c.l.b16 %v2049
  %v8329 = vunpack.c.l.b16 %v2050
  %v8330 = vunpack.c.l.b16 %v2051
  %v8331 = vunpack.c.l.b16 %v2052
  %v8332 = vunpack.c.l.b16 %v2053
  %v8333 = vunpack.c.l.b16 %v2054
  %v8334 = vunpack.c.l.b16 %v2055
  %v8335 = vunpack.c.l.b16 %v2056
  %v8336 = vunpack.c.l.b16 %v2057
  %v8337 = vunpack.c.l.b16 %v2058
  %v8338 = vunpack.c.l.b16 %v2059
  %v8339 = vunpack.c.l.b16 %v2060
  %v8340 = vunpack.c.l.b16 %v2061
  %v8341 = vunpack.c.l.b16 %v2062
  %v8342 = vunpack.c.l.b16 %v2063
  %v8343 = vunpack.c.l.b16 %v2064
  %v8344 = vunpack.c.l.b16 %v2065
  %v8345 = vunpack.c.l.b16 %v2066
  %v8346 = vunpack.c.l.b16 %v2067
  %v8347 = vunpack.c.l.b16 %v2068
  %v8348 = vunpack.c.l.b16 %v2069
  %v8349 = vunpack.c.l.b16 %v2070
  %v8350 = vunpack.c.l.b16 %v2071
  %v8351 = vunpack.c.l.b16 %v2072
  %v8352 = vunpack.c.l.b16 %v2073
  %v8353 = vunpack.c.l.b16 %v2074
  %v8354 = vunpack.c.l.b16 %v2075
  %v8355 = vunpack.c.l.b16 %v2076
  %v8356 = vunpack.c.l.b16 %v2077
  %v8357 = vunpack.c.l.b16 %v2078
  %v8358 = vunpack.c.l.b16 %v2079
  %v8359 = vunpack.c.l.b16 %v2080
  %v8360 = vunpack.c.l.b16 %v2081
  %v8361 = vunpack.c.l.b16 %v2082
  %v8362 = vunpack.c.l.b16 %v2083
  %v8363 = vunpack.c.l.b16 %v2084
  %v8364 = vunpack.c.l.b16 %v2085
  %v8365 = vunpack.c.l.b16 %v2086
  %v8366 = vunpack.c.l.b16 %v2087
  %v8367 = vunpack.c.l.b16 %v2088
  %v8368 = vunpack.c.l.b16 %v2089
  %v8369 = vunpack.c.l.b16 %v2090
  %v8370 = vunpack.c.l.b16 %v2091
  %v8371 = vunpack.c.l.b16 %v2092
  %v8372 = vunpack.c.l.b16 %v2093
  %v8373 = vunpack.c.l.b16 %v2094
  %v8374 = vunpack.c.l.b16 %v2095
  %v8375 = vunpack.c.l.b16 %v2096
  %v8376 = vunpack.c.l.b16 %v2097
  %v8377 = vunpack.c.l.b16 %v2098
  %v8378 = vunpack.c.l.b16 %v2099
  %v8379 = vunpack.c.l.b16 %v2100
  %v8380 = vunpack.c.l.b16 %v2101
  %v8381 = vunpack.c.l.b16 %v2102
  %v8382 = vunpack.c.l.b16 %v2103
  %v8383 = vunpack.c.l.b16 %v2104
  %v8384 = vunpack.c.l.b16 %v2105
  %v8385 = vunpack.c.l.b16 %v2106
  %v8386 = vunpack.c.l.b16 %v2107
  %v8387 = vunpack.c.l.b16 %v2108
  %v8388 = vunpack.c.l.b16 %v2109
  %v8389 = vunpack.c.l.b16 %v2110
  %v8390 = vunpack.c.l.b16 %v2111
  %v8391 = vunpack.c.l.b16 %v2112
  %v8392 = vunpack.c.l.b16 %v2113
  %v8393 = vunpack.c.l.b16 %v2114
  %v8394 = vunpack.c.l.b16 %v2115
  %v8395 = vunpack.c.l.b16 %v2116
  %v8396 = vunpack.c.l.b16 %v2117
  %v8397 = vunpack.c.l.b16 %v2118
  %v8398 = vunpack.c.l.b16 %v2119
  %v8399 = vunpack.c.l.b16 %v2120
  %v8400 = vunpack.c.l.b16 %v2121
  %v8401 = vunpack.c.l.b16 %v2122
  %v8402 = vunpack.c.l.b16 %v2123
  %v8403 = vunpack.c.l.b16 %v2124
  %v8404 = vunpack.c.l.b16 %v2125
  %v8405 = vunpack.c.l.b16 %v2126
  %v8406 = vunpack.c.l.b16 %v2127
  %v8407 = vunpack.c.l.b16 %v2128
  %v8408 = vunpack.c.l.b16 %v2129
  %v8409 = vunpack.c.l.b16 %v2130
  %v8410 = vunpack.c.l.b16 %v2131
  %v8411 = vunpack.c.l.b16 %v2132
  %v8412 = vunpack.c.l.b16 %v2133
  %v8413 = vunpack.c.l.b16 %v2134
  %v8414 = vunpack.c.l.b16 %v2135
  %v8415 = vunpack.c.l.b16 %v2136
  %v8416 = vunpack.c.l.b16 %v2137
  %v8417 = vunpack.c.l.b16 %v2138
  %v8418 = vunpack.c.l.b16 %v2139
  %v8419 = vunpack.c.l.b16 %v2140
  %v8420 = vunpack.c.l.b16 %v2141
  %v8421 = vunpack.c.l.b16 %v2142
  %v8422 = vunpack.c.l.b16 %v2143
  %v8423 = vunpack.c.l.b16 %v2144
  %v8424 = vunpack.c.l.b16 %v2145
  %v8425 = vunpack.c.l.b16 %v2146
  %v8426 = vunpack.c.l.b16 %v2147
  %v8427 = vunpack.c.l.b16 %v2148
  %v8428 = vunpack.c.l.b16 %v2149
  %v8429 = vunpack.c.l.b16 %v2150
  %v8430 = vunpack.c.l.b16 %v2151
  %v8431 = vunpack.c.l.b16 %v2152
  %v8432 = vunpack.c.l.b16 %v2153
  %v8433 = vunpack.c.l.b16 %v2154
  %v8434 = vunpack.c.l.b16 %v2155
  %v8435 = vunpack.c.l.b16 %v2156
  %v8436 = vunpack.c.l.b16 %v2157
  %v8437 = vunpack.c.l.b16 %v2158
  %v8438 = vunpack.c.l.b16 %v2159
  %v8439 = vunpack.c.l.b16 %v2160
  %v8440 = vunpack.c.l.b16 %v2161
  %v8441 = vunpack.c.l.b16 %v2162
  %v8442 = vunpack.c.l.b16 %v2163
  %v8443 = vunpack.c.l.b16 %v2164
  %v8444 = vunpack.c.l.b16 %v2165
  %v8445 = vunpack.c.l.b16 %v2166
  %v8446 = vunpack.c.l.b16 %v2167
  %v8447 = vunpack.c.l.b16 %v2168
  %v8448 = vunpack.c.l.b16 %v2169
  %v8449 = vunpack.c.l.b16 %v2170
  %v8450 = vunpack.c.l.b16 %v2171
  %v8451 = vunpack.c.l.b16 %v2172
  %v8452 = vunpack.c.l.b16 %v2173
  %v8453 = vunpack.c.l.b16 %v2174
  %v8454 = vunpack.c.l.b16 %v2175
  %v8455 = vunpack.c.l.b16 %v2176
  %v8456 = vunpack.c.l.b16 %v2177
  %v8457 = vunpack.c.l.b16 %v2178
  %v8458 = vunpack.c.l.b16 %v2179
  %v8459 = vunpack.c.l.b16 %v2180
  %v8460 = vunpack.c.l.b16 %v2181
  %v8461 = vunpack.c.l.b16 %v2182
  %v8462 = vunpack.c.l.b16 %v2183
  %v8463 = vunpack.c.l.b16 %v2184
  %v8464 = vunpack.c.l.b16 %v2185
  %v8465 = vunpack.c.l.b16 %v2186
  %v8466 = vunpack.c.l.b16 %v2187
  %v8467 = vunpack.c.l.b16 %v2188
  %v8468 = vunpack.c.l.b16 %v2189
  %v8469 = vunpack.c.l.b16 %v2190
  %v8470 = vunpack.c.l.b16 %v2191
  %v8471 = vunpack.c.l.b16 %v2192
  %v8472 = vunpack.c.l.b16 %v2193
  %v8473 = vunpack.c.l.b16 %v2194
  %v8474 = vunpack.c.l.b16 %v2195
  %v8475 = vunpack.c.l.b16 %v2196
  %v8476 = vunpack.c.l.b16 %v2197
  %v8477 = vunpack.c.l.b16 %v2198
  %v8478 = vunpack.c.l.b16 %v2199
  %v8479 = vunpack.c.l.b16 %v2200
  %v8480 = vunpack.c.l.b16 %v2201
  %v8481 = vunpack.c.l.b16 %v2202
  %v8482 = vunpack.c.l.b16 %v2203
  %v8483 = vunpack.c.l.b16 %v2204
  %v8484 = vunpack.c.l.b16 %v2205
  %v8485 = vunpack.c.l.b16 %v2206
  %v8486 = vunpack.c.l.b16 %v2207
  %v8487 = vunpack.c.l.b16 %v2208
  %v8488 = vunpack.c.l.b16 %v2209
  %v8489 = vunpack.c.l.b16 %v2210
  %v8490 = vunpack.c.l.b16 %v2211
  %v8491 = vunpack.c.l.b16 %v2212
  %v8492 = vunpack.c.l.b16 %v2213
  %v8493 = vunpack.c.l.b16 %v2214
  %v8494 = vunpack.c.l.b16 %v2215
  %v8495 = vunpack.c.l.b16 %v2216
  %v8496 = vunpack.c.l.b16 %v2217
  %v8497 = vunpack.c.l.b16 %v2218
  %v8498 = vunpack.c.l.b16 %v2219
  %v8499 = vunpack.c.l.b16 %v2220
  %v8500 = vunpack.c.l.b16 %v2221
  %v8501 = vunpack.c.l.b16 %v2222
  %v8502 = vunpack.c.l.b16 %v2223
  %v8503 = vunpack.c.l.b16 %v2224
  %v8504 = vunpack.c.l.b16 %v2225
  %v8505 = vunpack.c.l.b16 %v2226
  %v8506 = vunpack.c.l.b16 %v2227
  %v8507 = vunpack.c.l.b16 %v2228
  %v8508 = vunpack.c.l.b16 %v2229
  %v8509 = vunpack.c.l.b16 %v2230
  %v8510 = vunpack.c.l.b16 %v2231
  %v8511 = vunpack.c.l.b16 %v2232
  %v8512 = vunpack.c.l.b16 %v2233
  %v8513 = vunpack.c.l.b16 %v2234
  %v8514 = vunpack.c.l.b16 %v2235
  %v8515 = vunpack.c.l.b16 %v2236
  %v8516 = vunpack.c.l.b16 %v2237
  %v8517 = vunpack.c.l.b16 %v2238
  %v8518 = vunpack.c.l.b16 %v2239
  %v8519 = vunpack.c.l.b16 %v2240
  %v8520 = vunpack.c.l.b16 %v2241
  %v8521 = vunpack.c.l.b16 %v2242
  %v8522 = vunpack.c.l.b16 %v2243
  %v8523 = vunpack.c.l.b16 %v2244
  %v8524 = vunpack.c.l.b16 %v2245
  %v8525 = vunpack.c.l.b16 %v2246
  %v8526 = vunpack.c.l.b16 %v2247
  %v8527 = vunpack.c.l.b16 %v2248
  %v8528 = vunpack.c.l.b16 %v2249
  %v8529 = vunpack.c.l.b16 %v2250
  %v8530 = vunpack.c.l.b16 %v2251
  %v8531 = vunpack.c.l.b16 %v2252
  %v8532 = vunpack.c.l.b16 %v2253
  %v8533 = vunpack.c.l.b16 %v2254
  %v8534 = vunpack.c.l.b16 %v2255
  %v8535 = vunpack.c.l.b16 %v2256
  %v8536 = vunpack.c.l.b16 %v2257
  %v8537 = vunpack.c.l.b16 %v2258
  %v8538 = vunpack.c.l.b16 %v2259
  %v8539 = vunpack.c.l.b16 %v2260
  %v8540 = vunpack.c.l.b16 %v2261
  %v8541 = vunpack.c.l.b16 %v2262
  %v8542 = vunpack.c.l.b16 %v2263
  %v8543 = vunpack.c.l.b16 %v2264
  %v8544 = vunpack.c.l.b16 %v2265
  %v8545 = vunpack.c.l.b16 %v2266
  %v8546 = vunpack.c.l.b16 %v2267
  %v8547 = vunpack.c.l.b16 %v2268
  %v8548 = vunpack.c.l.b16 %v2269
  %v8549 = vunpack.c.l.b16 %v2270
  %v8550 = vunpack.c.l.b16 %v2271
  %v8551 = vunpack.c.l.b16 %v2272
  %v8552 = vunpack.c.l.b16 %v2273
  %v8553 = vunpack.c.l.b16 %v2274
  %v8554 = vunpack.c.l.b16 %v2275
  %v8555 = vunpack.c.l.b16 %v2276
  %v8556 = vunpack.c.l.b16 %v2277
  %v8557 = vunpack.c.l.b16 %v2278
  %v8558 = vunpack.c.l.b16 %v2279
  %v8559 = vunpack.c.l.b16 %v2280
  %v8560 = vunpack.c.l.b16 %v2281
  %v8561 = vunpack.c.l.b16 %v2282
  %v8562 = vunpack.c.l.b16 %v2283
  %v8563 = vunpack.c.l.b16 %v2284
  %v8564 = vunpack.c.l.b16 %v2285
  %v8565 = vunpack.c.l.b16 %v2286
  %v8566 = vunpack.c.l.b16 %v2287
  %v8567 = vunpack.c.l.b16 %v2288
  %v8568 = vunpack.c.l.b16 %v2289
  %v8569 = vunpack.c.l.b16 %v2290
  %v8570 = vunpack.c.l.b16 %v2291
  %v8571 = vunpack.c.l.b16 %v2292
  %v8572 = vunpack.c.l.b16 %v2293
  %v8573 = vunpack.c.l.b16 %v2294
  %v8574 = vunpack.c.l.b16 %v2295
  %v8575 = vunpack.c.l.b16 %v2296
  %v8576 = vunpack.c.l.b16 %v2297
  %v8577 = vunpack.c.l.b16 %v2298
  %v8578 = vunpack.c.l.b16 %v2299
  %v8579 = vunpack.c.l.b16 %v2300
  %v8580 = vunpack.c.l.b16 %v2301
  %v8581 = vunpack.c.l.b16 %v2302
  %v8582 = vunpack.c.l.b16 %v2303
  %v8583 = vunpack.c.l.b16 %v2304
  %v8584 = vunpack.c.l.b16 %v2305
  %v8585 = vunpack.c.l.b16 %v2306
  %v8586 = vunpack.c.l.b16 %v2307
  %v8587 = vunpack.c.l.b16 %v2308
  %v8588 = vunpack.c.l.b16 %v2309
  %v8589 = vunpack.c.l.b16 %v2310
  %v8590 = vunpack.c.l.b16 %v2311
  %v8591 = vunpack.c.l.b16 %v2312
  %v8592 = vunpack.c.l.b16 %v2313
  %v8593 = vunpack.c.l.b16 %v2314
  %v8594 = vunpack.c.l.b16 %v2315
  %v8595 = vunpack.c.l.b16 %v2316
  %v8596 = vunpack.c.l.b16 %v2317
  %v8597 = vunpack.c.l.b16 %v2318
  %v8598 = vunpack.c.l.b16 %v2319
  %v8599 = vunpack.c.l.b16 %v2320
  %v8600 = vunpack.c.l.b16 %v2321
  %v8601 = vunpack.c.l.b16 %v2322
  %v8602 = vunpack.c.l.b16 %v2323
  %v8603 = vunpack.c.l.b16 %v2324
  %v8604 = vunpack.c.l.b16 %v2325
  %v8605 = vunpack.c.l.b16 %v2326
  %v8606 = vunpack.c.l.b16 %v2327
  %v8607 = vunpack.c.l.b16 %v2328
  %v8608 = vunpack.c.l.b16 %v2329
  %v8609 = vunpack.c.l.b16 %v2330
  %v8610 = vunpack.c.l.b16 %v2331
  %v8611 = vunpack.c.l.b16 %v2332
  %v8612 = vunpack.c.l.b16 %v2333
  %v8613 = vunpack.c.l.b16 %v2334
  %v8614 = vunpack.c.l.b16 %v2335
  %v8615 = vunpack.c.l.b16 %v2336
  %v8616 = vunpack.c.l.b16 %v2337
  %v8617 = vunpack.c.l.b16 %v2338
  %v8618 = vunpack.c.l.b16 %v2339
  %v8619 = vunpack.c.l.b16 %v2340
  %v8620 = vunpack.c.l.b16 %v2341
  %v8621 = vunpack.c.l.b16 %v2342
  %v8622 = vunpack.c.l.b16 %v2343
  %v8623 = vunpack.c.l.b16 %v2344
  %v8624 = vunpack.c.l.b16 %v2345
  %v8625 = vunpack.c.l.b16 %v2346
  %v8626 = vunpack.c.l.b16 %v2347
  %v8627 = vunpack.c.l.b16 %v2348
  %v8628 = vunpack.c.l.b16 %v2349
  %v8629 = vunpack.c.l.b16 %v2350
  %v8630 = vunpack.c.l.b16 %v2351
  %v8631 = vunpack.c.l.b16 %v2352
  %v8632 = vunpack.c.l.b16 %v2353
  %v8633 = vunpack.c.l.b16 %v2354
  %v8634 = vunpack.c.l.b16 %v2355
  %v8635 = vunpack.c.l.b16 %v2356
  %v8636 = vunpack.c.l.b16 %v2357
  %v8637 = vunpack.c.l.b16 %v2358
  %v8638 = vunpack.c.l.b16 %v2359
  %v8639 = vunpack.c.l.b16 %v2360
  %v8640 = vunpack.c.l.b16 %v2361
  %v8641 = vunpack.c.l.b16 %v2362
  %v8642 = vunpack.c.l.b16 %v2363
  %v8643 = vunpack.c.l.b16 %v2364
  %v8644 = vunpack.c.l.b16 %v2365
  %v8645 = vunpack.c.l.b16 %v2366
  %v8646 = vunpack.c.l.b16 %v2367
  %v8647 = vunpack.c.l.b16 %v2368
  %v8648 = vunpack.c.l.b16 %v2369
  %v8649 = vunpack.c.l.b16 %v2370
  %v8650 = vunpack.c.l.b16 %v2371
  %v8651 = vunpack.c.l.b16 %v2372
  %v8652 = vunpack.c.l.b16 %v2373
  %v8653 = vunpack.c.l.b16 %v2374
  %v8654 = vunpack.c.l.b16 %v2375
  %v8655 = vunpack.c.l.b16 %v2376
  %v8656 = vunpack.c.l.b16 %v2377
  %v8657 = vunpack.c.l.b16 %v2378
  %v8658 = vunpack.c.l.b16 %v2379
  %v8659 = vunpack.c.l.b16 %v2380
  %v8660 = vunpack.c.l.b16 %v2381
  %v8661 = vunpack.c.l.b16 %v2382
  %v8662 = vunpack.c.l.b16 %v2383
  %v8663 = vunpack.c.l.b16 %v2384
  %v8664 = vunpack.c.l.b16 %v2385
  %v8665 = vunpack.c.l.b16 %v2386
  %v8666 = vunpack.c.l.b16 %v2387
  %v8667 = vunpack.c.l.b16 %v2388
  %v8668 = vunpack.c.l.b16 %v2389
  %v8669 = vunpack.c.l.b16 %v2390
  %v8670 = vunpack.c.l.b16 %v2391
  %v8671 = vunpack.c.l.b16 %v2392
  %v8672 = vunpack.c.l.b16 %v2393
  %v8673 = vunpack.c.l.b16 %v2394
  %v8674 = vunpack.c.l.b16 %v2395
  %v8675 = vunpack.c.l.b16 %v2396
  %v8676 = vunpack.c.l.b16 %v2397
  %v8677 = vunpack.c.l.b16 %v2398
  %v8678 = vunpack.c.l.b16 %v2399
  %v8679 = vunpack.c.l.b16 %v2400
  %v8680 = vunpack.c.l.b16 %v2401
  %v8681 = vunpack.c.l.b16 %v2402
  %v8682 = vunpack.c.l.b16 %v2403
  %v8683 = vunpack.c.l.b16 %v2404
  %v8684 = vunpack.c.l.b16 %v2405
  %v8685 = vunpack.c.l.b16 %v2406
  %v8686 = vunpack.c.l.b16 %v2407
  %v8687 = vunpack.c.l.b16 %v2408
  %v8688 = vunpack.c.l.b16 %v2409
  %v8689 = vunpack.c.l.b16 %v2410
  %v8690 = vunpack.c.l.b16 %v2411
  %v8691 = vunpack.c.l.b16 %v2412
  %v8692 = vunpack.c.l.b16 %v2413
  %v8693 = vunpack.c.l.b16 %v2414
  %v8694 = vunpack.c.l.b16 %v2415
  %v8695 = vunpack.c.l.b16 %v2416
  %v8696 = vunpack.c.l.b16 %v2417
  %v8697 = vunpack.c.l.b16 %v2418
  %v8698 = vunpack.c.l.b16 %v2419
  %v8699 = vunpack.c.l.b16 %v2420
  %v8700 = vunpack.c.l.b16 %v2421
  %v8701 = vunpack.c.l.b16 %v2422
  %v8702 = vunpack.c.l.b16 %v2423
  %v8703 = vunpack.c.l.b16 %v2424
  %v8704 = vunpack.c.l.b16 %v2425
  %v8705 = vunpack.c.l.b16 %v2426
  %v8706 = vunpack.c.l.b16 %v2427
  %v8707 = vunpack.c.l.b16 %v2428
  %v8708 = vunpack.c.l.b16 %v2429
  %v8709 = vunpack.c.l.b16 %v2430
  %v8710 = vunpack.c.l.b16 %v2431
  %v8711 = vunpack.c.l.b16 %v2432
  %v8712 = vunpack.c.l.b16 %v2433
  %v8713 = vunpack.c.l.b16 %v2434
  %v8714 = vunpack.c.l.b16 %v2435
  %v8715 = vunpack.c.l.b16 %v2436
  %v8716 = vunpack.c.l.b16 %v2437
  %v8717 = vunpack.c.l.b16 %v2438
  %v8718 = vunpack.c.l.b16 %v2439
  %v8719 = vunpack.c.l.b16 %v2440
  %v8720 = vunpack.c.l.b16 %v2441
  %v8721 = vunpack.c.l.b16 %v2442
  %v8722 = vunpack.c.l.b16 %v2443
  %v8723 = vunpack.c.l.b16 %v2444
  %v8724 = vunpack.c.l.b16 %v2445
  %v8725 = vunpack.c.l.b16 %v2446
  %v8726 = vunpack.c.l.b16 %v2447
  %v8727 = vunpack.c.l.b16 %v2448
  %v8728 = vunpack.c.l.b16 %v2449
  %v8729 = vunpack.c.l.b16 %v2450
  %v8730 = vunpack.c.l.b16 %v2451
  %v8731 = vunpack.c.l.b16 %v2452
  %v8732 = vunpack.c.l.b16 %v2453
  %v8733 = vunpack.c.l.b16 %v2454
  %v8734 = vunpack.c.l.b16 %v2455
  %v8735 = vunpack.c.l.b16 %v2456
  %v8736 = vunpack.c.l.b16 %v2457
  %v8737 = vunpack.c.l.b16 %v2458
  %v8738 = vunpack.c.l.b16 %v2459
  %v8739 = vunpack.c.l.b16 %v2460
  %v8740 = vunpack.c.l.b16 %v2461
  %v8741 = vunpack.c.l.b16 %v2462
  %v8742 = vunpack.c.l.b16 %v2463
  %v8743 = vunpack.c.l.b16 %v2464
  %v8744 = vunpack.c.l.b16 %v2465
  %v8745 = vunpack.c.l.b16 %v2466
  %v8746 = vunpack.c.l.b16 %v2467
  %v8747 = vunpack.c.l.b16 %v2468
  %v8748 = vunpack.c.l.b16 %v2469
  %v8749 = vunpack.c.l.b16 %v2470
  %v8750 = vunpack.c.l.b16 %v2471
  %v8751 = vunpack.c.l.b16 %v2472
  %v8752 = vunpack.c.l.b16 %v2473
  %v8753 = vunpack.c.l.b16 %v2474
  %v8754 = vunpack.c.l.b16 %v2475
  %v8755 = vunpack.c.l.b16 %v2476
  %v8756 = vunpack.c.l.b16 %v2477
  %v8757 = vunpack.c.l.b16 %v2478
  %v8758 = vunpack.c.l.b16 %v2479
  %v8759 = vunpack.c.l.b16 %v2480
  %v8760 = vunpack.c.l.b16 %v2481
  %v8761 = vunpack.c.l.b16 %v2482
  %v8762 = vunpack.c.l.b16 %v2483
  %v8763 = vunpack.c.l.b16 %v2484
  %v8764 = vunpack.c.l.b16 %v2485
  %v8765 = vunpack.c.l.b16 %v2486
  %v8766 = vunpack.c.l.b16 %v2487
  %v8767 = vunpack.c.l.b16 %v2488
  %v8768 = vunpack.c.l.b16 %v2489
  %v8769 = vunpack.c.l.b16 %v2490
  %v8770 = vunpack.c.l.b16 %v2491
  %v8771 = vunpack.c.l.b16 %v2492
  %v8772 = vunpack.c.l.b16 %v2493
  %v8773 = vunpack.c.l.b16 %v2494
  %v8774 = vunpack.c.l.b16 %v2495
  %v8775 = vunpack.c.l.b16 %v2496
  %v8776 = vunpack.c.l.b16 %v2497
  %v8777 = vunpack.c.l.b16 %v2498
  %v8778 = vunpack.c.l.b16 %v2499
  %v8779 = vunpack.c.l.b16 %v2500
  %v8780 = vunpack.c.l.b16 %v2501
  %v8781 = vunpack.c.l.b16 %v2502
  %v8782 = vunpack.c.l.b16 %v2503
  %v8783 = vunpack.c.l.b16 %v2504
  %v8784 = vunpack.c.l.b16 %v2505
  %v8785 = vunpack.c.l.b16 %v2506
  %v8786 = vunpack.c.l.b16 %v2507
  %v8787 = vunpack.c.l.b16 %v2508
  %v8788 = vunpack.c.l.b16 %v2509
  %v8789 = vunpack.c.l.b16 %v2510
  %v8790 = vunpack.c.l.b16 %v2511
  %v8791 = vunpack.c.l.b16 %v2512
  %v8792 = vunpack.c.l.b16 %v2513
  %v8793 = vunpack.c.l.b16 %v2514
  %v8794 = vunpack.c.l.b16 %v2515
  %v8795 = vunpack.c.l.b16 %v2516
  %v8796 = vunpack.c.l.b16 %v2517
  %v8797 = vunpack.c.l.b16 %v2518
  %v8798 = vunpack.c.l.b16 %v2519
  %v8799 = vunpack.c.l.b16 %v2520
  %v8800 = vunpack.c.l.b16 %v2521
  %v8801 = vunpack.c.l.b16 %v2522
  %v8802 = vunpack.c.l.b16 %v2523
  %v8803 = vunpack.c.l.b16 %v2524
  %v8804 = vunpack.c.l.b16 %v2525
  %v8805 = vunpack.c.l.b16 %v2526
  %v8806 = vunpack.c.l.b16 %v2527
  %v8807 = vunpack.c.l.b16 %v2528
  %v8808 = vunpack.c.l.b16 %v2529
  %v8809 = vunpack.c.l.b16 %v2530
  %v8810 = vunpack.c.l.b16 %v2531
  %v8811 = vunpack.c.l.b16 %v2532
  %v8812 = vunpack.c.l.b16 %v2533
  %v8813 = vunpack.c.l.b16 %v2534
  %v8814 = vunpack.c.l.b16 %v2535
  %v8815 = vunpack.c.l.b16 %v2536
  %v8816 = vunpack.c.l.b16 %v2537
  %v8817 = vunpack.c.l.b16 %v2538
  %v8818 = vunpack.c.l.b16 %v2539
  %v8819 = vunpack.c.l.b16 %v2540
  %v8820 = vunpack.c.l.b16 %v2541
  %v8821 = vunpack.c.l.b16 %v2542
  %v8822 = vunpack.c.l.b16 %v2543
  %v8823 = vunpack.c.l.b16 %v2544
  %v8824 = vunpack.c.l.b16 %v2545
  %v8825 = vunpack.c.l.b16 %v2546
  %v8826 = vunpack.c.l.b16 %v2547
  %v8827 = vunpack.c.l.b16 %v2548
  %v8828 = vunpack.c.l.b16 %v2549
  %v8829 = vunpack.c.l.b16 %v2550
  %v8830 = vunpack.c.l.b16 %v2551
  %v8831 = vunpack.c.l.b16 %v2552
  %v8832 = vunpack.c.l.b16 %v2553
  %v8833 = vunpack.c.l.b16 %v2554
  %v8834 = vunpack.c.l.b16 %v2555
  %v8835 = vunpack.c.l.b16 %v2556
  %v8836 = vunpack.c.l.b16 %v2557
  %v8837 = vunpack.c.l.b16 %v2558
  %v8838 = vunpack.c.l.b16 %v2559
  %v8839 = vunpack.c.l.b16 %v2560
  %v8840 = vunpack.c.l.b16 %v2561
  %v8841 = vunpack.c.l.b16 %v2562
  %v8842 = vunpack.c.l.b16 %v2563
  %v8843 = vunpack.c.l.b16 %v2564
  %v8844 = vunpack.c.l.b16 %v2565
  %v8845 = vunpack.c.l.b16 %v2566
  %v8846 = vunpack.c.l.b16 %v2567
  %v8847 = vunpack.c.l.b16 %v2568
  %v8848 = vunpack.c.l.b16 %v2569
  %v8849 = vunpack.c.l.b16 %v2570
  %v8850 = vunpack.c.l.b16 %v2571
  %v8851 = vunpack.c.l.b16 %v2572
  %v8852 = vunpack.c.l.b16 %v2573
  %v8853 = vunpack.c.l.b16 %v2574
  %v8854 = vunpack.c.l.b16 %v2575
  %v8855 = vunpack.c.l.b16 %v2576
  %v8856 = vunpack.c.l.b16 %v2577
  %v8857 = vunpack.c.l.b16 %v2578
  %v8858 = vunpack.c.l.b16 %v2579
  %v8859 = vunpack.c.l.b16 %v2580
  %v8860 = vunpack.c.l.b16 %v2581
  %v8861 = vunpack.c.l.b16 %v2582
  %v8862 = vunpack.c.l.b16 %v2583
  %v8863 = vunpack.c.l.b16 %v2584
  %v8864 = vunpack.c.l.b16 %v2585
  %v8865 = vunpack.c.l.b16 %v2586
  %v8866 = vunpack.c.l.b16 %v2587
  %v8867 = vunpack.c.l.b16 %v2588
  %v8868 = vunpack.c.l.b16 %v2589
  %v8869 = vunpack.c.l.b16 %v2590
  %v8870 = vunpack.c.l.b16 %v2591
  %v8871 = vunpack.c.l.b16 %v2592
  %v8872 = vunpack.c.l.b16 %v2593
  %v8873 = vunpack.c.l.b16 %v2594
  %v8874 = vunpack.c.l.b16 %v2595
  %v8875 = vunpack.c.l.b16 %v2596
  %v8876 = vunpack.c.l.b16 %v2597
  %v8877 = vunpack.c.l.b16 %v2598
  %v8878 = vunpack.c.l.b16 %v2599
  %v8879 = vunpack.c.l.b16 %v2600
  %v8880 = vunpack.c.l.b16 %v2601
  %v8881 = vunpack.c.l.b16 %v2602
  %v8882 = vunpack.c.l.b16 %v2603
  %v8883 = vunpack.c.l.b16 %v2604
  %v8884 = vunpack.c.l.b16 %v2605
  %v8885 = vunpack.c.l.b16 %v2606
  %v8886 = vunpack.c.l.b16 %v2607
  %v8887 = vunpack.c.l.b16 %v2608
  %v8888 = vunpack.c.l.b16 %v2609
  %v8889 = vunpack.c.l.b16 %v2610
  %v8890 = vunpack.c.l.b16 %v2611
  %v8891 = vunpack.c.l.b16 %v2612
  %v8892 = vunpack.c.l.b16 %v2613
  %v8893 = vunpack.c.l.b16 %v2614
  %v8894 = vunpack.c.l.b16 %v2615
  %v8895 = vunpack.c.l.b16 %v2616
  %v8896 = vunpack.c.l.b16 %v2617
  %v8897 = vunpack.c.l.b16 %v2618
  %v8898 = vunpack.c.l.b16 %v2619
  %v8899 = vunpack.c.l.b16 %v2620
  %v8900 = vunpack.c.l.b16 %v2621
  %v8901 = vunpack.c.l.b16 %v2622
  %v8902 = vunpack.c.l.b16 %v2623
  %v8903 = vunpack.c.l.b16 %v2624
  %v8904 = vunpack.c.l.b16 %v2625
  %v8905 = vunpack.c.l.b16 %v2626
  %v8906 = vunpack.c.l.b16 %v2627
  %v8907 = vunpack.c.l.b16 %v2628
  %v8908 = vunpack.c.l.b16 %v2629
  %v8909 = vunpack.c.l.b16 %v2630
  %v8910 = vunpack.c.l.b16 %v2631
  %v8911 = vunpack.c.l.b16 %v2632
  %v8912 = vunpack.c.l.b16 %v2633
  %v8913 = vunpack.c.l.b16 %v2634
  %v8914 = vunpack.c.l.b16 %v2635
  %v8915 = vunpack.c.l.b16 %v2636
  %v8916 = vunpack.c.l.b16 %v2637
  %v8917 = vunpack.c.l.b16 %v2638
  %v8918 = vunpack.c.l.b16 %v2639
  %v8919 = vunpack.c.l.b16 %v2640
  %v8920 = vunpack.c.l.b16 %v2641
  %v8921 = vunpack.c.l.b16 %v2642
  %v8922 = vunpack.c.l.b16 %v2643
  %v8923 = vunpack.c.l.b16 %v2644
  %v8924 = vunpack.c.l.b16 %v2645
  %v8925 = vunpack.c.l.b16 %v2646
  %v8926 = vunpack.c.l.b16 %v2647
  %v8927 = vunpack.c.l.b16 %v2648
  %v8928 = vunpack.c.l.b16 %v2649
  %v8929 = vunpack.c.l.b16 %v2650
  %v8930 = vunpack.c.l.b16 %v2651
  %v8931 = vunpack.c.l.b16 %v2652
  %v8932 = vunpack.c.l.b16 %v2653
  %v8933 = vunpack.c.l.b16 %v2654
  %v8934 = vunpack.c.l.b16 %v2655
  %v8935 = vunpack.c.l.b16 %v2656
  %v8936 = vunpack.c.l.b16 %v2657
  %v8937 = vunpack.c.l.b16 %v2658
  %v8938 = vunpack.c.l.b16 %v2659
  %v8939 = vunpack.c.l.b16 %v2660
  %v8940 = vunpack.c.l.b16 %v2661
  %v8941 = vunpack.c.l.b16 %v2662
  %v8942 = vunpack.c.l.b16 %v2663
  %v8943 = vunpack.c.l.b16 %v2664
  %v8944 = vunpack.c.l.b16 %v2665
  %v8945 = vunpack.c.l.b16 %v2666
  %v8946 = vunpack.c.l.b16 %v2667
  %v8947 = vunpack.c.l.b16 %v2668
  %v8948 = vunpack.c.l.b16 %v2669
  %v8949 = vunpack.c.l.b16 %v2670
  %v8950 = vunpack.c.l.b16 %v2671
  %v8951 = vunpack.c.l.b16 %v2672
  %v8952 = vunpack.c.l.b16 %v2673
  %v8953 = vunpack.c.l.b16 %v2674
  %v8954 = vunpack.c.l.b16 %v2675
  %v8955 = vunpack.c.l.b16 %v2676
  %v8956 = vunpack.c.l.b16 %v2677
  %v8957 = vunpack.c.l.b16 %v2678
  %v8958 = vunpack.c.l.b16 %v2679
  %v8959 = vunpack.c.l.b16 %v2680
  %v8960 = vunpack.c.l.b16 %v2681
  %v8961 = vunpack.c.l.b16 %v2682
  %v8962 = vunpack.c.l.b16 %v2683
  %v8963 = vunpack.c.l.b16 %v2684
  %v8964 = vunpack.c.l.b16 %v2685
  %v8965 = vunpack.c.l.b16 %v2686
  %v8966 = vunpack.c.l.b16 %v2687
  %v8967 = vunpack.c.l.b16 %v2688
  %v8968 = vunpack.c.l.b16 %v2689
  %v8969 = vunpack.c.l.b16 %v2690
  %v8970 = vunpack.c.l.b16 %v2691
  %v8971 = vunpack.c.l.b16 %v2692
  %v8972 = vunpack.c.l.b16 %v2693
  %v8973 = vunpack.c.l.b16 %v2694
  %v8974 = vunpack.c.l.b16 %v2695
  %v8975 = vunpack.c.l.b16 %v2696
  %v8976 = vunpack.c.l.b16 %v2697
  %v8977 = vunpack.c.l.b16 %v2698
  %v8978 = vunpack.c.l.b16 %v2699
  %v8979 = vunpack.c.l.b16 %v2700
  %v8980 = vunpack.c.l.b16 %v2701
  %v8981 = vunpack.c.l.b16 %v2702
  %v8982 = vunpack.c.l.b16 %v2703
  %v8983 = vunpack.c.l.b16 %v2704
  %v8984 = vunpack.c.l.b16 %v2705
  %v8985 = vunpack.c.l.b16 %v2706
  %v8986 = vunpack.c.l.b16 %v2707
  %v8987 = vunpack.c.l.b16 %v2708
  %v8988 = vunpack.c.l.b16 %v2709
  %v8989 = vunpack.c.l.b16 %v2710
  %v8990 = vunpack.c.l.b16 %v2711
  %v8991 = vunpack.c.l.b16 %v2712
  %v8992 = vunpack.c.l.b16 %v2713
  %v8993 = vunpack.c.l.b16 %v2714
  %v8994 = vunpack.c.l.b16 %v2715
  %v8995 = vunpack.c.l.b16 %v2716
  %v8996 = vunpack.c.l.b16 %v2717
  %v8997 = vunpack.c.l.b16 %v2718
  %v8998 = vunpack.c.l.b16 %v2719
  %v8999 = vunpack.c.l.b16 %v2720
  %v9000 = vunpack.c.l.b16 %v2721
  %v9001 = vunpack.c.l.b16 %v2722
  %v9002 = vunpack.c.l.b16 %v2723
  %v9003 = vunpack.c.l.b16 %v2724
  %v9004 = vunpack.c.l.b16 %v2725
  %v9005 = vunpack.c.l.b16 %v2726
  %v9006 = vunpack.c.l.b16 %v2727
  %v9007 = vunpack.c.l.b16 %v2728
  %v9008 = vunpack.c.l.b16 %v2729
  %v9009 = vunpack.c.l.b16 %v2730
  %v9010 = vunpack.c.l.b16 %v2731
  %v9011 = vunpack.c.l.b16 %v2732
  %v9012 = vunpack.c.l.b16 %v2733
  %v9013 = vunpack.c.l.b16 %v2734
  %v9014 = vunpack.c.l.b16 %v2735
  %v9015 = vunpack.c.l.b16 %v2736
  %v9016 = vunpack.c.l.b16 %v2737
  %v9017 = vunpack.c.l.b16 %v2738
  %v9018 = vunpack.c.l.b16 %v2739
  %v9019 = vunpack.c.l.b16 %v2740
  %v9020 = vunpack.c.l.b16 %v2741
  %v9021 = vunpack.c.l.b16 %v2742
  %v9022 = vunpack.c.l.b16 %v2743
  %v9023 = vunpack.c.l.b16 %v2744
  %v9024 = vunpack.c.l.b16 %v2745
  %v9025 = vunpack.c.l.b16 %v2746
  %v9026 = vunpack.c.l.b16 %v2747
  %v9027 = vunpack.c.l.b16 %v2748
  %v9028 = vunpack.c.l.b16 %v2749
  %v9029 = vunpack.c.l.b16 %v2750
  %v9030 = vunpack.c.l.b16 %v2751
  %v9031 = vunpack.c.l.b16 %v2752
  %v9032 = vunpack.c.l.b16 %v2753
  %v9033 = vunpack.c.l.b16 %v2754
  %v9034 = vunpack.c.l.b16 %v2755
  %v9035 = vunpack.c.l.b16 %v2756
  %v9036 = vunpack.c.l.b16 %v2757
  %v9037 = vunpack.c.l.b16 %v2758
  %v9038 = vunpack.c.l.b16 %v2759
  %v9039 = vunpack.c.l.b16 %v2760
  %v9040 = vunpack.c.l.b16 %v2761
  %v9041 = vunpack.c.l.b16 %v2762
  %v9042 = vunpack.c.l.b16 %v2763
  %v9043 = vunpack.c.l.b16 %v2764
  %v9044 = vunpack.c.l.b16 %v2765
  %v9045 = vunpack.c.l.b16 %v2766
  %v9046 = vunpack.c.l.b16 %v2767
  %v9047 = vunpack.c.l.b16 %v2768
  %v9048 = vunpack.c.l.b16 %v2769
  %v9049 = vunpack.c.l.b16 %v2770
  %v9050 = vunpack.c.l.b16 %v2771
  %v9051 = vunpack.c.l.b16 %v2772
  %v9052 = vunpack.c.l.b16 %v2773
  %v9053 = vunpack.c.l.b16 %v2774
  %v9054 = vunpack.c.l.b16 %v2775
  %v9055 = vunpack.c.l.b16 %v2776
  %v9056 = vunpack.c.l.b16 %v2777
  %v9057 = vunpack.c.l.b16 %v2778
  %v9058 = vunpack.c.l.b16 %v2779
  %v9059 = vunpack.c.l.b16 %v2780
  %v9060 = vunpack.c.l.b16 %v2781
  %v9061 = vunpack.c.l.b16 %v2782
  %v9062 = vunpack.c.l.b16 %v2783
  %v9063 = vunpack.c.l.b16 %v2784
  %v9064 = vunpack.c.l.b16 %v2785
  %v9065 = vunpack.c.l.b16 %v2786
  %v9066 = vunpack.c.l.b16 %v2787
  %v9067 = vunpack.c.l.b16 %v2788
  %v9068 = vunpack.c.l.b16 %v2789
  %v9069 = vunpack.c.l.b16 %v2790
  %v9070 = vunpack.c.l.b16 %v2791
  %v9071 = vunpack.c.l.b16 %v2792
  %v9072 = vunpack.c.l.b16 %v2793
  %v9073 = vunpack.c.l.b16 %v2794
  %v9074 = vunpack.c.l.b16 %v2795
  %v9075 = vunpack.c.l.b16 %v2796
  %v9076 = vunpack.c.l.b16 %v2797
  %v9077 = vunpack.c.l.b16 %v2798
  %v9078 = vunpack.c.l.b16 %v2799
  %v9079 = vunpack.c.l.b16 %v2800
  %v9080 = vunpack.c.l.b16 %v2801
  %v9081 = vunpack.c.l.b16 %v2802
  %v9082 = vunpack.c.l.b16 %v2803
  %v9083 = vunpack.c.l.b16 %v2804
  %v9084 = vunpack.c.l.b16 %v2805
  %v9085 = vunpack.c.l.b16 %v2806
  %v9086 = vunpack.c.l.b16 %v2807
  %v9087 = vunpack.c.l.b16 %v2808
  %v9088 = vunpack.c.l.b16 %v2809
  %v9089 = vunpack.c.l.b16 %v2810
  %v9090 = vunpack.c.l.b16 %v2811
  %v9091 = vunpack.c.l.b16 %v2812
  %v9092 = vunpack.c.l.b16 %v2813
  %v9093 = vunpack.c.l.b16 %v2814
  %v9094 = vunpack.c.l.b16 %v2815
  %v9095 = vunpack.c.l.b16 %v2816
  %v9096 = vunpack.c.l.b16 %v2817
  %v9097 = vunpack.c.l.b16 %v2818
  %v9098 = vunpack.c.l.b16 %v2819
  %v9099 = vunpack.c.l.b16 %v2820
  %v9100 = vunpack.c.l.b16 %v2821
  %v9101 = vunpack.c.l.b16 %v2822
  %v9102 = vunpack.c.l.b16 %v2823
  %v9103 = vunpack.c.l.b16 %v2824
  %v9104 = vunpack.c.l.b16 %v2825
  %v9105 = vunpack.c.l.b16 %v2826
  %v9106 = vunpack.c.l.b16 %v2827
  %v9107 = vunpack.c.l.b16 %v2828
  %v9108 = vunpack.c.l.b16 %v2829
  %v9109 = vunpack.c.l.b16 %v2830
  %v9110 = vunpack.c.l.b16 %v2831
  %v9111 = vunpack.c.l.b16 %v2832
  %v9112 = vunpack.c.l.b16 %v2833
  %v9113 = vunpack.c.l.b16 %v2834
  %v9114 = vunpack.c.l.b16 %v2835
  %v9115 = vunpack.c.l.b16 %v2836
  %v9116 = vunpack.c.l.b16 %v2837
  %v9117 = vunpack.c.l.b16 %v2838
  %v9118 = vunpack.c.l.b16 %v2839
  %v9119 = vunpack.c.l.b16 %v2840
  %v9120 = vunpack.c.l.b16 %v2841
  %v9121 = vunpack.c.l.b16 %v2842
  %v9122 = vunpack.c.l.b16 %v2843
  %v9123 = vunpack.c.l.b16 %v2844
  %v9124 = vunpack.c.l.b16 %v2845
  %v9125 = vunpack.c.l.b16 %v2846
  %v9126 = vunpack.c.l.b16 %v2847
  %v9127 = vunpack.c.l.b16 %v2848
  %v9128 = vunpack.c.l.b16 %v2849
  %v9129 = vunpack.c.l.b16 %v2850
  %v9130 = vunpack.c.l.b16 %v2851
  %v9131 = vunpack.c.l.b16 %v2852
  %v9132 = vunpack.c.l.b16 %v2853
  %v9133 = vunpack.c.l.b16 %v2854
  %v9134 = vunpack.c.l.b16 %v2855
  %v9135 = vunpack.c.l.b16 %v2856
  %v9136 = vunpack.c.l.b16 %v2857
  %v9137 = vunpack.c.l.b16 %v2858
  %v9138 = vunpack.c.l.b16 %v2859
  %v9139 = vunpack.c.l.b16 %v2860
  %v9140 = vunpack.c.l.b16 %v2861
  %v9141 = vunpack.c.l.b16 %v2862
  %v9142 = vunpack.c.l.b16 %v2863
  %v9143 = vunpack.c.l.b16 %v2864
  %v9144 = vunpack.c.l.b16 %v2865
  %v9145 = vunpack.c.l.b16 %v2866
  %v9146 = vunpack.c.l.b16 %v2867
  %v9147 = vunpack.c.l.b16 %v2868
  %v9148 = vunpack.c.l.b16 %v2869
  %v9149 = vunpack.c.l.b16 %v2870
  %v9150 = vunpack.c.l.b16 %v2871
  %v9151 = vunpack.c.l.b16 %v2872
  %v9152 = vunpack.c.l.b16 %v2873
  %v9153 = vunpack.c.l.b16 %v2874
  %v9154 = vunpack.c.l.b16 %v2875
  %v9155 = vunpack.c.l.b16 %v2876
  %v9156 = vunpack.c.l.b16 %v2877
  %v9157 = vunpack.c.l.b16 %v2878
  %v9158 = vunpack.c.l.b16 %v2879
  %v9159 = vunpack.c.l.b16 %v2880
  %v9160 = vunpack.c.l.b16 %v2881
  %v9161 = vunpack.c.l.b16 %v2882
  %v9162 = vunpack.c.l.b16 %v2883
  %v9163 = vunpack.c.l.b16 %v2884
  %v9164 = vunpack.c.l.b16 %v2885
  %v9165 = vunpack.c.l.b16 %v2886
  %v9166 = vunpack.c.l.b16 %v2887
  %v9167 = vunpack.c.l.b16 %v2888
  %v9168 = vunpack.c.l.b16 %v2889
  %v9169 = vunpack.c.l.b16 %v2890
  %v9170 = vunpack.c.l.b16 %v2891
  %v9171 = vunpack.c.l.b16 %v2892
  %v9172 = vunpack.c.l.b16 %v2893
  %v9173 = vunpack.c.l.b16 %v2894
  %v9174 = vunpack.c.l.b16 %v2895
  %v9175 = vunpack.c.l.b16 %v2896
  %v9176 = vunpack.c.l.b16 %v2897
  %v9177 = vunpack.c.l.b16 %v2898
  %v9178 = vunpack.c.l.b16 %v2899
  %v9179 = vunpack.c.l.b16 %v2900
  %v9180 = vunpack.c.l.b16 %v2901
  %v9181 = vunpack.c.l.b16 %v2902
  %v9182 = vunpack.c.l.b16 %v2903
  %v9183 = vunpack.c.l.b16 %v2904
  %v9184 = vunpack.c.l.b16 %v2905
  %v9185 = vunpack.c.l.b16 %v2906
  %v9186 = vunpack.c.l.b16 %v2907
  %v9187 = vunpack.c.l.b16 %v2908
  %v9188 = vunpack.c.l.b16 %v2909
  %v9189 = vunpack.c.l.b16 %v2910
  %v9190 = vunpack.c.l.b16 %v2911
  %v9191 = vunpack.c.l.b16 %v2912
  %v9192 = vunpack.c.l.b16 %v2913
  %v9193 = vunpack.c.l.b16 %v2914
  %v9194 = vunpack.c.l.b16 %v2915
  %v9195 = vunpack.c.l.b16 %v2916
  %v9196 = vunpack.c.l.b16 %v2917
  %v9197 = vunpack.c.l.b16 %v2918
  %v9198 = vunpack.c.l.b16 %v2919
  %v9199 = vunpack.c.l.b16 %v2920
  %v9200 = vunpack.c.l.b16 %v2921
  %v9201 = vunpack.c.l.b16 %v2922
  %v9202 = vunpack.c.l.b16 %v2923
  %v9203 = vunpack.c.l.b16 %v2924
  %v9204 = vunpack.c.l.b16 %v2925
  %v9205 = vunpack.c.l.b16 %v2926
  %v9206 = vunpack.c.l.b16 %v2927
  %v9207 = vunpack.c.l.b16 %v2928
  %v9208 = vunpack.c.l.b16 %v2929
  %v9209 = vunpack.c.l.b16 %v2930
  %v9210 = vunpack.c.l.b16 %v2931
  %v9211 = vunpack.c.l.b16 %v2932
  %v9212 = vunpack.c.l.b16 %v2933
  %v9213 = vunpack.c.l.b16 %v2934
  %v9214 = vunpack.c.l.b16 %v2935
  %v9215 = vunpack.c.l.b16 %v2936
  %v9216 = vunpack.c.l.b16 %v2937
  %v9217 = vunpack.c.l.b16 %v2938
  %v9218 = vunpack.c.l.b16 %v2939
  %v9219 = vunpack.c.l.b16 %v2940
  %v9220 = vunpack.c.l.b16 %v2941
  %v9221 = vunpack.c.l.b16 %v2942
  %v9222 = vunpack.c.l.b16 %v2943
  %v9223 = vunpack.c.l.b16 %v2944
  %v9224 = vunpack.c.l.b16 %v2945
  %v9225 = vunpack.c.l.b16 %v2946
  %v9226 = vunpack.c.l.b16 %v2947
  %v9227 = vunpack.c.l.b16 %v2948
  %v9228 = vunpack.c.l.b16 %v2949
  %v9229 = vunpack.c.l.b16 %v2950
  %v9230 = vunpack.c.l.b16 %v2951
  %v9231 = vunpack.c.l.b16 %v2952
  %v9232 = vunpack.c.l.b16 %v2953
  %v9233 = vunpack.c.l.b16 %v2954
  %v9234 = vunpack.c.l.b16 %v2955
  %v9235 = vunpack.c.l.b16 %v2956
  %v9236 = vunpack.c.l.b16 %v2957
  %v9237 = vunpack.c.l.b16 %v2958
  %v9238 = vunpack.c.l.b16 %v2959
  %v9239 = vunpack.c.l.b16 %v2960
  %v9240 = vunpack.c.l.b16 %v2961
  %v9241 = vunpack.c.l.b16 %v2962
  %v9242 = vunpack.c.l.b16 %v2963
  %v9243 = vunpack.c.l.b16 %v2964
  %v9244 = vunpack.c.l.b16 %v2965
  %v9245 = vunpack.c.l.b16 %v2966
  %v9246 = vunpack.c.l.b16 %v2967
  %v9247 = vunpack.c.l.b16 %v2968
  %v9248 = vunpack.c.l.b16 %v2969
  %v9249 = vunpack.c.l.b16 %v2970
  %v9250 = vunpack.c.l.b16 %v2971
  %v9251 = vunpack.c.l.b16 %v2972
  %v9252 = vunpack.c.l.b16 %v2973
  %v9253 = vunpack.c.l.b16 %v2974
  %v9254 = vunpack.c.l.b16 %v2975
  %v9255 = vunpack.c.l.b16 %v2976
  %v9256 = vunpack.c.l.b16 %v2977
  %v9257 = vunpack.c.l.b16 %v2978
  %v9258 = vunpack.c.l.b16 %v2979
  %v9259 = vunpack.c.l.b16 %v2980
  %v9260 = vunpack.c.l.b16 %v2981
  %v9261 = vunpack.c.l.b16 %v2982
  %v9262 = vunpack.c.l.b16 %v2983
  %v9263 = vunpack.c.l.b16 %v2984
  %v9264 = vunpack.c.l.b16 %v2985
  %v9265 = vunpack.c.l.b16 %v2986
  %v9266 = vunpack.c.l.b16 %v2987
  %v9267 = vunpack.c.l.b16 %v2988
  %v9268 = vunpack.c.l.b16 %v2989
  %v9269 = vunpack.c.l.b16 %v2990
  %v9270 = vunpack.c.l.b16 %v2991
  %v9271 = vunpack.c.l.b16 %v2992
  %v9272 = vunpack.c.l.b16 %v2993
  %v9273 = vunpack.c.l.b16 %v2994
  %v9274 = vunpack.c.l.b16 %v2995
  %v9275 = vunpack.c.l.b16 %v2996
  %v9276 = vunpack.c.l.b16 %v2997
  %v9277 = vunpack.c.l.b16 %v2998
  %v9278 = vunpack.c.l.b16 %v2999
  %v9279 = vunpack.c.l.b16 %v3000
  %v9280 = vunpack.c.l.b16 %v3001
  %v9281 = vunpack.c.l.b16 %v3002
  %v9282 = vunpack.c.l.b16 %v3003
  %v9283 = vunpack.c.l.b16 %v3004
  %v9284 = vunpack.c.l.b16 %v3005
  %v9285 = vunpack.c.l.b16 %v3006
  %v9286 = vunpack.c.l.b16 %v3007
  %v9287 = vunpack.c.l.b16 %v3008
  %v9288 = vunpack.c.l.b16 %v3009
  %v9289 = vunpack.c.l.b16 %v3010
  %v9290 = vunpack.c.l.b16 %v3011
  %v9291 = vunpack.c.l.b16 %v3012
  %v9292 = vunpack.c.l.b16 %v3013
  %v9293 = vunpack.c.l.b16 %v3014
  %v9294 = vunpack.c.l.b16 %v3015
  %v9295 = vunpack.c.l.b16 %v3016
  %v9296 = vunpack.c.l.b16 %v3017
  %v9297 = vunpack.c.l.b16 %v3018
  %v9298 = vunpack.c.l.b16 %v3019
  %v9299 = vunpack.c.l.b16 %v3020
  %v9300 = vunpack.c.l.b16 %v3021
  %v9301 = vunpack.c.l.b16 %v3022
  %v9302 = vunpack.c.l.b16 %v3023
  %v9303 = vunpack.c.l.b16 %v3024
  %v9304 = vunpack.c.l.b16 %v3025
  %v9305 = vunpack.c.l.b16 %v3026
  %v9306 = vunpack.c.l.b16 %v3027
  %v9307 = vunpack.c.l.b16 %v3028
  %v9308 = vunpack.c.l.b16 %v3029
  %v9309 = vunpack.c.l.b16 %v3030
  %v9310 = vunpack.c.l.b16 %v3031
  %v9311 = vunpack.c.l.b16 %v3032
  %v9312 = vunpack.c.l.b16 %v3033
  %v9313 = vunpack.c.l.b16 %v3034
  %v9314 = vunpack.c.l.b16 %v3035
  %v9315 = vunpack.c.l.b16 %v3036
  %v9316 = vunpack.c.l.b16 %v3037
  %v9317 = vunpack.c.l.b16 %v3038
  %v9318 = vunpack.c.l.b16 %v3039
  %v9319 = vunpack.c.l.b16 %v3040
  %v9320 = vunpack.c.l.b16 %v3041
  %v9321 = vunpack.c.l.b16 %v3042
  %v9322 = vunpack.c.l.b16 %v3043
  %v9323 = vunpack.c.l.b16 %v3044
  %v9324 = vunpack.c.l.b16 %v3045
  %v9325 = vunpack.c.l.b16 %v3046
  %v9326 = vunpack.c.l.b16 %v3047
  %v9327 = vunpack.c.l.b16 %v3048
  %v9328 = vunpack.c.l.b16 %v3049
  %v9329 = vunpack.c.l.b16 %v3050
  %v9330 = vunpack.c.l.b16 %v3051
  %v9331 = vunpack.c.l.b16 %v3052
  %v9332 = vunpack.c.l.b16 %v3053
  %v9333 = vunpack.c.l.b16 %v3054
  %v9334 = vunpack.c.l.b16 %v3055
  %v9335 = vunpack.c.l.b16 %v3056
  %v9336 = vunpack.c.l.b16 %v3057
  %v9337 = vunpack.c.l.b16 %v3058
  %v9338 = vunpack.c.l.b16 %v3059
  %v9339 = vunpack.c.l.b16 %v3060
  %v9340 = vunpack.c.l.b16 %v3061
  %v9341 = vunpack.c.l.b16 %v3062
  %v9342 = vunpack.c.l.b16 %v3063
  %v9343 = vunpack.c.l.b16 %v3064
  %v9344 = vunpack.c.l.b16 %v3065
  %v9345 = vunpack.c.l.b16 %v3066
  %v9346 = vunpack.c.l.b16 %v3067
  %v9347 = vunpack.c.l.b16 %v3068
  %v9348 = vunpack.c.l.b16 %v3069
  %v9349 = vunpack.c.l.b16 %v3070
  %v9350 = vunpack.c.l.b16 %v3071
  %v9351 = vunpack.c.l.b16 %v3072
  %v9352 = vunpack.c.l.b16 %v3073
  %v9353 = vunpack.c.l.b16 %v3074
  %v9354 = vunpack.c.l.b16 %v3075
  %v9355 = vunpack.c.l.b16 %v3076
  %v9356 = vunpack.c.l.b16 %v3077
  %v9357 = vunpack.c.l.b16 %v3078
  %v9358 = vunpack.c.l.b16 %v3079
  %v9359 = vunpack.c.l.b16 %v3080
  %v9360 = vunpack.c.l.b16 %v3081
  %v9361 = vunpack.c.l.b16 %v3082
  %v9362 = vunpack.c.l.b16 %v3083
  %v9363 = vunpack.c.l.b16 %v3084
  %v9364 = vunpack.c.l.b16 %v3085
  %v9365 = vunpack.c.l.b16 %v3086
  %v9366 = vunpack.c.l.b16 %v3087
  %v9367 = vunpack.c.l.b16 %v3088
  %v9368 = vunpack.c.l.b16 %v3089
  %v9369 = vunpack.c.l.b16 %v3090
  %v9370 = vunpack.c.l.b16 %v3091
  %v9371 = vunpack.c.l.b16 %v3092
  %v9372 = vunpack.c.l.b16 %v3093
  %v9373 = vunpack.c.l.b16 %v3094
  %v9374 = vunpack.c.l.b16 %v3095
  %v9375 = vunpack.c.l.b16 %v3096
  %v9376 = vunpack.c.l.b16 %v3097
  %v9377 = vunpack.c.l.b16 %v3098
  %v9378 = vunpack.c.l.b16 %v3099
  %v9379 = vunpack.c.l.b16 %v3100
  %v9380 = vunpack.c.l.b16 %v3101
  %v9381 = vunpack.c.l.b16 %v3102
  %v9382 = vunpack.c.l.b16 %v3103
  %v9383 = vunpack.c.l.b16 %v3104
  %v9384 = vunpack.c.l.b16 %v3105
  %v9385 = vunpack.c.l.b16 %v3106
  %v9386 = vunpack.c.l.b16 %v3107
  %v9387 = vunpack.c.l.b16 %v3108
  %v9388 = vunpack.c.l.b16 %v3109
  %v9389 = vunpack.c.l.b16 %v3110
  %v9390 = vunpack.c.l.b16 %v3111
  %v9391 = vunpack.c.l.b16 %v3112
  %v9392 = vunpack.c.l.b16 %v3113
  %v9393 = vunpack.c.l.b16 %v3114
  %v9394 = vunpack.c.l.b16 %v3115
  %v9395 = vunpack.c.l.b16 %v3116
  %v9396 = vunpack.c.l.b16 %v3117
  %v9397 = vunpack.c.l.b16 %v3118
  %v9398 = vunpack.c.l.b16 %v3119
  %v9399 = vunpack.c.l.b16 %v3120
  %v9400 = vunpack.c.l.b16 %v3121
  %v9401 = vunpack.c.l.b16 %v3122
  %v9402 = vunpack.c.l.b16 %v3123
  %v9403 = vunpack.c.l.b16 %v3124
  %v9404 = vunpack.c.l.b16 %v3125
  %v9405 = vunpack.c.l.b16 %v3126
  %v9406 = vunpack.c.l.b16 %v3127
  %v9407 = vunpack.c.l.b16 %v3128
  %v9408 = vunpack.c.l.b16 %v3129
  %v9409 = vunpack.c.l.b16 %v3130
  %v9410 = vunpack.c.l.b16 %v3131
  %v9411 = vunpack.c.l.b16 %v3132
  %v9412 = vunpack.c.l.b16 %v3133
  %v9413 = vunpack.c.l.b16 %v3134
  %v9414 = vunpack.c.l.b16 %v3135
  %v9415 = vunpack.c.l.b16 %v3136
  %v9416 = vunpack.c.l.b16 %v3137
  %v9417 = vunpack.c.l.b16 %v3138
  %v9418 = vunpack.c.l.b16 %v3139
  %v9419 = vunpack.c.l.b16 %v3140
  %v9420 = vunpack.c.l.b16 %v3141
  %v9421 = vunpack.c.l.b16 %v3142
  %v9422 = vunpack.c.l.b16 %v3143
  %v9423 = vunpack.c.l.b16 %v3144
  %v9424 = vunpack.c.l.b16 %v3145
  %v9425 = vunpack.c.l.b16 %v3146
  %v9426 = vunpack.c.l.b16 %v3147
  %v9427 = vunpack.c.l.b16 %v3148
  %v9428 = vunpack.c.l.b16 %v3149
  %v9429 = vunpack.c.l.b16 %v3150
  %v9430 = vunpack.c.l.b16 %v3151
  %v9431 = vunpack.c.l.b16 %v3152
  %v9432 = vunpack.c.l.b16 %v3153
  %v9433 = vunpack.c.l.b16 %v3154
  %v9434 = vunpack.c.l.b16 %v3155
  %v9435 = vunpack.c.l.b16 %v3156
  %v9436 = vunpack.c.l.b16 %v3157
  %v9437 = vunpack.c.l.b16 %v3158
  %v9438 = vunpack.c.l.b16 %v3159
  %v9439 = vunpack.c.l.b16 %v3160
  %v9440 = vunpack.c.l.b16 %v3161
  %v9441 = vunpack.c.l.b16 %v3162
  %v9442 = vunpack.c.l.b16 %v3163
  %v9443 = vunpack.c.l.b16 %v3164
  %v9444 = vunpack.c.l.b16 %v3165
  %v9445 = vunpack.c.l.b16 %v3166
  %v9446 = vunpack.c.l.b16 %v3167
  %v9447 = vunpack.c.l.b16 %v3168
  %v9448 = vunpack.c.l.b16 %v3169
  %v9449 = vunpack.c.l.b16 %v3170
  %v9450 = vunpack.c.l.b16 %v3171
  %v9451 = vunpack.c.l.b16 %v3172
  %v9452 = vunpack.c.l.b16 %v3173
  %v9453 = vunpack.c.l.b16 %v3174
  %v9454 = vunpack.c.l.b16 %v3175
  %v9455 = vunpack.c.l.b16 %v3176
  %v9456 = vunpack.c.l.b16 %v3177
  %v9457 = vunpack.c.l.b16 %v3178
  %v9458 = vunpack.c.l.b16 %v3179
  %v9459 = vunpack.c.l.b16 %v3180
  %v9460 = vunpack.c.l.b16 %v3181
  %v9461 = vunpack.c.l.b16 %v3182
  %v9462 = vunpack.c.l.b16 %v3183
  %v9463 = vunpack.c.l.b16 %v3184
  %v9464 = vunpack.c.l.b16 %v3185
  %v9465 = vunpack.c.l.b16 %v3186
  %v9466 = vunpack.c.l.b16 %v3187
  %v9467 = vunpack.c.l.b16 %v3188
  %v9468 = vunpack.c.l.b16 %v3189
  %v9469 = vunpack.c.l.b16 %v3190
  %v9470 = vunpack.c.l.b16 %v3191
  %v9471 = vunpack.c.l.b16 %v3192
  %v9472 = vunpack.c.l.b16 %v3193
  %v9473 = vunpack.c.l.b16 %v3194
  %v9474 = vunpack.c.l.b16 %v3195
  %v9475 = vunpack.c.l.b16 %v3196
  %v9476 = vunpack.c.l.b16 %v3197
  %v9477 = vunpack.c.l.b16 %v3198
  %v9478 = vunpack.c.l.b16 %v3199
  %v9479 = vunpack.c.l.b16 %v3200
  %v9480 = vunpack.c.l.b16 %v3201
  %v9481 = vunpack.c.l.b16 %v3202
  %v9482 = vunpack.c.l.b16 %v3203
  %v9483 = vunpack.c.l.b16 %v3204
  %v9484 = vunpack.c.l.b16 %v3205
  %v9485 = vunpack.c.l.b16 %v3206
  %v9486 = vunpack.c.l.b16 %v3207
  %v9487 = vunpack.c.l.b16 %v3208
  %v9488 = vunpack.c.l.b16 %v3209
  %v9489 = vunpack.c.l.b16 %v3210
  %v9490 = vunpack.c.l.b16 %v3211
  %v9491 = vunpack.c.l.b16 %v3212
  %v9492 = vunpack.c.l.b16 %v3213
  %v9493 = vunpack.c.l.b16 %v3214
  %v9494 = vunpack.c.l.b16 %v3215
  %v9495 = vunpack.c.l.b16 %v3216
  %v9496 = vunpack.c.l.b16 %v3217
  %v9497 = vunpack.c.l.b16 %v3218
  %v9498 = vunpack.c.l.b16 %v3219
  %v9499 = vunpack.c.l.b16 %v3220
  %v9500 = vunpack.c.l.b16 %v3221
  %v9501 = vunpack.c.l.b16 %v3222
  %v9502 = vunpack.c.l.b16 %v3223
  %v9503 = vunpack.c.l.b16 %v3224
  %v9504 = vunpack.c.l.b16 %v3225
  %v9505 = vunpack.c.l.b16 %v3226
  %v9506 = vunpack.c.l.b16 %v3227
  %v9507 = vunpack.c.l.b16 %v3228
  %v9508 = vunpack.c.l.b16 %v3229
  %v9509 = vunpack.c.l.b16 %v3230
  %v9510 = vunpack.c.l.b16 %v3231
  %v9511 = vunpack.c.l.b16 %v3232
  %v9512 = vunpack.c.l.b16 %v3233
  %v9513 = vunpack.c.l.b16 %v3234
  %v9514 = vunpack.c.l.b16 %v3235
  %v9515 = vunpack.c.l.b16 %v3236
  %v9516 = vunpack.c.l.b16 %v3237
  %v9517 = vunpack.c.l.b16 %v3238
  %v9518 = vunpack.c.l.b16 %v3239
  %v9519 = vunpack.c.l.b16 %v3240
  %v9520 = vunpack.c.l.b16 %v3241
  %v9521 = vunpack.c.l.b16 %v3242
  %v9522 = vunpack.c.l.b16 %v3243
  %v9523 = vunpack.c.l.b16 %v3244
  %v9524 = vunpack.c.l.b16 %v3245
  %v9525 = vunpack.c.l.b16 %v3246
  %v9526 = vunpack.c.l.b16 %v3247
  %v9527 = vunpack.c.l.b16 %v3248
  %v9528 = vunpack.c.l.b16 %v3249
  %v9529 = vunpack.c.l.b16 %v3250
  %v9530 = vunpack.c.l.b16 %v3251
  %v9531 = vunpack.c.l.b16 %v3252
  %v9532 = vunpack.c.l.b16 %v3253
  %v9533 = vunpack.c.l.b16 %v3254
  %v9534 = vunpack.c.l.b16 %v3255
  %v9535 = vunpack.c.l.b16 %v3256
  %v9536 = vunpack.c.l.b16 %v3257
  %v9537 = vunpack.c.l.b16 %v3258
  %v9538 = vunpack.c.l.b16 %v3259
  %v9539 = vunpack.c.l.b16 %v3260
  %v9540 = vunpack.c.l.b16 %v3261
  %v9541 = vunpack.c.l.b16 %v3262
  %v9542 = vunpack.c.l.b16 %v3263
  %v9543 = vunpack.c.l.b16 %v3264
  %v9544 = vunpack.c.l.b16 %v3265
  %v9545 = vunpack.c.l.b16 %v3266
  %v9546 = vunpack.c.l.b16 %v3267
  %v9547 = vunpack.c.l.b16 %v3268
  %v9548 = vunpack.c.l.b16 %v3269
  %v9549 = vunpack.c.l.b16 %v3270
  %v9550 = vunpack.c.l.b16 %v3271
  %v9551 = vunpack.c.l.b16 %v3272
  %v9552 = vunpack.c.l.b16 %v3273
  %v9553 = vunpack.c.l.b16 %v3274
  %v9554 = vunpack.c.l.b16 %v3275
  %v9555 = vunpack.c.l.b16 %v3276
  %v9556 = vunpack.c.l.b16 %v3277
  %v9557 = vunpack.c.l.b16 %v3278
  %v9558 = vunpack.c.l.b16 %v3279
  %v9559 = vunpack.c.l.b16 %v3280
  %v9560 = vunpack.c.l.b16 %v3281
  %v9561 = vunpack.c.l.b16 %v3282
  %v9562 = vunpack.c.l.b16 %v3283
  %v9563 = vunpack.c.l.b16 %v3284
  %v9564 = vunpack.c.l.b16 %v3285
  %v9565 = vunpack.c.l.b16 %v3286
  %v9566 = vunpack.c.l.b16 %v3287
  %v9567 = vunpack.c.l.b16 %v3288
  %v9568 = vunpack.c.l.b16 %v3289
  %v9569 = vunpack.c.l.b16 %v3290
  %v9570 = vunpack.c.l.b16 %v3291
  %v9571 = vunpack.c.l.b16 %v3292
  %v9572 = vunpack.c.l.b16 %v3293
  %v9573 = vunpack.c.l.b16 %v3294
  %v9574 = vunpack.c.l.b16 %v3295
  %v9575 = vunpack.c.l.b16 %v3296
  %v9576 = vunpack.c.l.b16 %v3297
  %v9577 = vunpack.c.l.b16 %v3298
  %v9578 = vunpack.c.l.b16 %v3299
  %v9579 = vunpack.c.l.b16 %v3300
  %v9580 = vunpack.c.l.b16 %v3301
  %v9581 = vunpack.c.l.b16 %v3302
  %v9582 = vunpack.c.l.b16 %v3303
  %v9583 = vunpack.c.l.b16 %v3304
  %v9584 = vunpack.c.l.b16 %v3305
  %v9585 = vunpack.c.l.b16 %v3306
  %v9586 = vunpack.c.l.b16 %v3307
  %v9587 = vunpack.c.l.b16 %v3308
  %v9588 = vunpack.c.l.b16 %v3309
  %v9589 = vunpack.c.l.b16 %v3310
  %v9590 = vunpack.c.l.b16 %v3311
  %v9591 = vunpack.c.l.b16 %v3312
  %v9592 = vunpack.c.l.b16 %v3313
  %v9593 = vunpack.c.l.b16 %v3314
  %v9594 = vunpack.c.l.b16 %v3315
  %v9595 = vunpack.c.l.b16 %v3316
  %v9596 = vunpack.c.l.b16 %v3317
  %v9597 = vunpack.c.l.b16 %v3318
  %v9598 = vunpack.c.l.b16 %v3319
  %v9599 = vunpack.c.l.b16 %v3320
  %v9600 = vunpack.c.l.b16 %v3321
  %v9601 = vunpack.c.l.b16 %v3322
  %v9602 = vunpack.c.l.b16 %v3323
  %v9603 = vunpack.c.l.b16 %v3324
  %v9604 = vunpack.c.l.b16 %v3325
  %v9605 = vunpack.c.l.b16 %v3326
  %v9606 = vunpack.c.l.b16 %v3327
  %v9607 = vunpack.c.l.b16 %v3328
  %v9608 = vunpack.c.l.b16 %v3329
  %v9609 = vunpack.c.l.b16 %v3330
  %v9610 = vunpack.c.l.b16 %v3331
  %v9611 = vunpack.c.l.b16 %v3332
  %v9612 = vunpack.c.l.b16 %v3333
  %v9613 = vunpack.c.l.b16 %v3334
  %v9614 = vunpack.c.l.b16 %v3335
  %v9615 = vunpack.c.l.b16 %v3336
  %v9616 = vunpack.c.l.b16 %v3337
  %v9617 = vunpack.c.l.b16 %v3338
  %v9618 = vunpack.c.l.b16 %v3339
  %v9619 = vunpack.c.l.b16 %v3340
  %v9620 = vunpack.c.l.b16 %v3341
  %v9621 = vunpack.c.l.b16 %v3342
  %v9622 = vunpack.c.l.b16 %v3343
  %v9623 = vunpack.c.l.b16 %v3344
  %v9624 = vunpack.c.l.b16 %v3345
  %v9625 = vunpack.c.l.b16 %v3346
  %v9626 = vunpack.c.l.b16 %v3347
  %v9627 = vunpack.c.l.b16 %v3348
  %v9628 = vunpack.c.l.b16 %v3349
  %v9629 = vunpack.c.l.b16 %v3350
  %v9630 = vunpack.c.l.b16 %v3351
  %v9631 = vunpack.c.l.b16 %v3352
  %v9632 = vunpack.c.l.b16 %v3353
  %v9633 = vunpack.c.l.b16 %v3354
  %v9634 = vunpack.c.l.b16 %v3355
  %v9635 = vunpack.c.l.b16 %v3356
  %v9636 = vunpack.c.l.b16 %v3357
  %v9637 = vunpack.c.l.b16 %v3358
  %v9638 = vunpack.c.l.b16 %v3359
  %v9639 = vunpack.c.l.b16 %v3360
  %v9640 = vunpack.c.l.b16 %v3361
  %v9641 = vunpack.c.l.b16 %v3362
  %v9642 = vunpack.c.l.b16 %v3363
  %v9643 = vunpack.c.l.b16 %v3364
  %v9644 = vunpack.c.l.b16 %v3365
  %v9645 = vunpack.c.l.b16 %v3366
  %v9646 = vunpack.c.l.b16 %v3367
  %v9647 = vunpack.c.l.b16 %v3368
  %v9648 = vunpack.c.l.b16 %v3369
  %v9649 = vunpack.c.l.b16 %v3370
  %v9650 = vunpack.c.l.b16 %v3371
  %v9651 = vunpack.c.l.b16 %v3372
  %v9652 = vunpack.c.l.b16 %v3373
  %v9653 = vunpack.c.l.b16 %v3374
  %v9654 = vunpack.c.l.b16 %v3375
  %v9655 = vunpack.c.l.b16 %v3376
  %v9656 = vunpack.c.l.b16 %v3377
  %v9657 = vunpack.c.l.b16 %v3378
  %v9658 = vunpack.c.l.b16 %v3379
  %v9659 = vunpack.c.l.b16 %v3380
  %v9660 = vunpack.c.l.b16 %v3381
  %v9661 = vunpack.c.l.b16 %v3382
  %v9662 = vunpack.c.l.b16 %v3383
  %v9663 = vunpack.c.l.b16 %v3384
  %v9664 = vunpack.c.l.b16 %v3385
  %v9665 = vunpack.c.l.b16 %v3386
  %v9666 = vunpack.c.l.b16 %v3387
  %v9667 = vunpack.c.l.b16 %v3388
  %v9668 = vunpack.c.l.b16 %v3389
  %v9669 = vunpack.c.l.b16 %v3390
  %v9670 = vunpack.c.l.b16 %v3391
  %v9671 = vunpack.c.l.b16 %v3392
  %v9672 = vunpack.c.l.b16 %v3393
  %v9673 = vunpack.c.l.b16 %v3394
  %v9674 = vunpack.c.l.b16 %v3395
  %v9675 = vunpack.c.l.b16 %v3396
  %v9676 = vunpack.c.l.b16 %v3397
  %v9677 = vunpack.c.l.b16 %v3398
  %v9678 = vunpack.c.l.b16 %v3399
  %v9679 = vunpack.c.l.b16 %v3400
  %v9680 = vunpack.c.l.b16 %v3401
  %v9681 = vunpack.c.l.b16 %v3402
  %v9682 = vunpack.c.l.b16 %v3403
  %v9683 = vunpack.c.l.b16 %v3404
  %v9684 = vunpack.c.l.b16 %v3405
  %v9685 = vunpack.c.l.b16 %v3406
  %v9686 = vunpack.c.l.b16 %v3407
  %v9687 = vunpack.c.l.b16 %v3408
  %v9688 = vunpack.c.l.b16 %v3409
  %v9689 = vunpack.c.l.b16 %v3410
  %v9690 = vunpack.c.l.b16 %v3411
  %v9691 = vunpack.c.l.b16 %v3412
  %v9692 = vunpack.c.l.b16 %v3413
  %v9693 = vunpack.c.l.b16 %v3414
  %v9694 = vunpack.c.l.b16 %v3415
  %v9695 = vunpack.c.l.b16 %v3416
  %v9696 = vunpack.c.l.b16 %v3417
  %v9697 = vunpack.c.l.b16 %v3418
  %v9698 = vunpack.c.l.b16 %v3419
  %v9699 = vunpack.c.l.b16 %v3420
  %v9700 = vunpack.c.l.b16 %v3421
  %v9701 = vunpack.c.l.b16 %v3422
  %v9702 = vunpack.c.l.b16 %v3423
  %v9703 = vunpack.c.l.b16 %v3424
  %v9704 = vunpack.c.l.b16 %v3425
  %v9705 = vunpack.c.l.b16 %v3426
  %v9706 = vunpack.c.l.b16 %v3427
  %v9707 = vunpack.c.l.b16 %v3428
  %v9708 = vunpack.c.l.b16 %v3429
  %v9709 = vunpack.c.l.b16 %v3430
  %v9710 = vunpack.c.l.b16 %v3431
  %v9711 = vunpack.c.l.b16 %v3432
  %v9712 = vunpack.c.l.b16 %v3433
  %v9713 = vunpack.c.l.b16 %v3434
  %v9714 = vunpack.c.l.b16 %v3435
  %v9715 = vunpack.c.l.b16 %v3436
  %v9716 = vunpack.c.l.b16 %v3437
  %v9717 = vunpack.c.l.b16 %v3438
  %v9718 = vunpack.c.l.b16 %v3439
  %v9719 = vunpack.c.l.b16 %v3440
  %v9720 = vunpack.c.l.b16 %v3441
  %v9721 = vunpack.c.l.b16 %v3442
  %v9722 = vunpack.c.l.b16 %v3443
  %v9723 = vunpack.c.l.b16 %v3444
  %v9724 = vunpack.c.l.b16 %v3445
  %v9725 = vunpack.c.l.b16 %v3446
  %v9726 = vunpack.c.l.b16 %v3447
  %v9727 = vunpack.c.l.b16 %v3448
  %v9728 = vunpack.c.l.b16 %v3449
  %v9729 = vunpack.c.l.b16 %v3450
  %v9730 = vunpack.c.l.b16 %v3451
  %v9731 = vunpack.c.l.b16 %v3452
  %v9732 = vunpack.c.l.b16 %v3453
  %v9733 = vunpack.c.l.b16 %v3454
  %v9734 = vunpack.c.l.b16 %v3455
  %v9735 = vunpack.c.l.b16 %v3456
  %v9736 = vunpack.c.l.b16 %v3457
  %v9737 = vunpack.c.l.b16 %v3458
  %v9738 = vunpack.c.l.b16 %v3459
  %v9739 = vunpack.c.l.b16 %v3460
  %v9740 = vunpack.c.l.b16 %v3461
  %v9741 = vunpack.c.l.b16 %v3462
  %v9742 = vunpack.c.l.b16 %v3463
  %v9743 = vunpack.c.l.b16 %v3464
  %v9744 = vunpack.c.l.b16 %v3465
  %v9745 = vunpack.c.l.b16 %v3466
  %v9746 = vunpack.c.l.b16 %v3467
  %v9747 = vunpack.c.l.b16 %v3468
  %v9748 = vunpack.c.l.b16 %v3469
  %v9749 = vunpack.c.l.b16 %v3470
  %v9750 = vunpack.c.l.b16 %v3471
  %v9751 = vunpack.c.l.b16 %v3472
  %v9752 = vunpack.c.l.b16 %v3473
  %v9753 = vunpack.c.l.b16 %v3474
  %v9754 = vunpack.c.l.b16 %v3475
  %v9755 = vunpack.c.l.b16 %v3476
  %v9756 = vunpack.c.l.b16 %v3477
  %v9757 = vunpack.c.l.b16 %v3478
  %v9758 = vunpack.c.l.b16 %v3479
  %v9759 = vunpack.c.l.b16 %v3480
  %v9760 = vunpack.c.l.b16 %v3481
  %v9761 = vunpack.c.l.b16 %v3482
  %v9762 = vunpack.c.l.b16 %v3483
  %v9763 = vunpack.c.l.b16 %v3484
  %v9764 = vunpack.c.l.b16 %v3485
  %v9765 = vunpack.c.l.b16 %v3486
  %v9766 = vunpack.c.l.b16 %v3487
  %v9767 = vunpack.c.l.b16 %v3488
  %v9768 = vunpack.c.l.b16 %v3489
  %v9769 = vunpack.c.l.b16 %v3490
  %v9770 = vunpack.c.l.b16 %v3491
  %v9771 = vunpack.c.l.b16 %v3492
  %v9772 = vunpack.c.l.b16 %v3493
  %v9773 = vunpack.c.l.b16 %v3494
  %v9774 = vunpack.c.l.b16 %v3495
  %v9775 = vunpack.c.l.b16 %v3496
  %v9776 = vunpack.c.l.b16 %v3497
  %v9777 = vunpack.c.l.b16 %v3498
  %v9778 = vunpack.c.l.b16 %v3499
  %v9779 = vunpack.c.l.b16 %v3500
  %v9780 = vunpack.c.l.b16 %v3501
  %v9781 = vunpack.c.l.b16 %v3502
  %v9782 = vunpack.c.l.b16 %v3503
  %v9783 = vunpack.c.l.b16 %v3504
  %v9784 = vunpack.c.l.b16 %v3505
  %v9785 = vunpack.c.l.b16 %v3506
  %v9786 = vunpack.c.l.b16 %v3507
  %v9787 = vunpack.c.l.b16 %v3508
  %v9788 = vunpack.c.l.b16 %v3509
  %v9789 = vunpack.c.l.b16 %v3510
  %v9790 = vunpack.c.l.b16 %v3511
  %v9791 = vunpack.c.l.b16 %v3512
  %v9792 = vunpack.c.l.b16 %v3513
  %v9793 = vunpack.c.l.b16 %v3514
  %v9794 = vunpack.c.l.b16 %v3515
  %v9795 = vunpack.c.l.b16 %v3516
  %v9796 = vunpack.c.l.b16 %v3517
  %v9797 = vunpack.c.l.b16 %v3518
  %v9798 = vunpack.c.l.b16 %v3519
  %v9799 = vunpack.c.l.b16 %v3520
  %v9800 = vunpack.c.l.b16 %v3521
  %v9801 = vunpack.c.l.b16 %v3522
  %v9802 = vunpack.c.l.b16 %v3523
  %v9803 = vunpack.c.l.b16 %v3524
  %v9804 = vunpack.c.l.b16 %v3525
  %v9805 = vunpack.c.l.b16 %v3526
  %v9806 = vunpack.c.l.b16 %v3527
  %v9807 = vunpack.c.l.b16 %v3528
  %v9808 = vunpack.c.l.b16 %v3529
  %v9809 = vunpack.c.l.b16 %v3530
  %v9810 = vunpack.c.l.b16 %v3531
  %v9811 = vunpack.c.l.b16 %v3532
  %v9812 = vunpack.c.l.b16 %v3533
  %v9813 = vunpack.c.l.b16 %v3534
  %v9814 = vunpack.c.l.b16 %v3535
  %v9815 = vunpack.c.l.b16 %v3536
  %v9816 = vunpack.c.l.b16 %v3537
  %v9817 = vunpack.c.l.b16 %v3538
  %v9818 = vunpack.c.l.b16 %v3539
  %v9819 = vunpack.c.l.b16 %v3540
  %v9820 = vunpack.c.l.b16 %v3541
  %v9821 = vunpack.c.l.b16 %v3542
  %v9822 = vpack.c.b16 %v6687, %v6686
  %v9823 = vpack.c.b16 %v6689, %v6688
  %v9824 = vpack.c.b16 %v6691, %v6690
  %v9825 = vpack.c.b16 %v6693, %v6692
  %v9826 = vpack.c.b16 %v6695, %v6694
  %v9827 = vpack.c.b16 %v6697, %v6696
  %v9828 = vpack.c.b16 %v6699, %v6698
  %v9829 = vpack.c.b16 %v6701, %v6700
  %v9830 = vpack.c.b16 %v6703, %v6702
  %v9831 = vpack.c.b16 %v6705, %v6704
  %v9832 = vpack.c.b16 %v6707, %v6706
  %v9833 = vpack.c.b16 %v6709, %v6708
  %v9834 = vpack.c.b16 %v6711, %v6710
  %v9835 = vpack.c.b16 %v6713, %v6712
  %v9836 = vpack.c.b16 %v6715, %v6714
  %v9837 = vpack.c.b16 %v6717, %v6716
  %v9838 = vpack.c.b16 %v6719, %v6718
  %v9839 = vpack.c.b16 %v6721, %v6720
  %v9840 = vpack.c.b16 %v6723, %v6722
  %v9841 = vpack.c.b16 %v6725, %v6724
  %v9842 = vpack.c.b16 %v6727, %v6726
  %v9843 = vpack.c.b16 %v6729, %v6728
  %v9844 = vpack.c.b16 %v6731, %v6730
  %v9845 = vpack.c.b16 %v6733, %v6732
  %v9846 = vpack.c.b16 %v6735, %v6734
  %v9847 = vpack.c.b16 %v6737, %v6736
  %v9848 = vpack.c.b16 %v6739, %v6738
  %v9849 = vpack.c.b16 %v6741, %v6740
  %v9850 = vpack.c.b16 %v6743, %v6742
  %v9851 = vpack.c.b16 %v6745, %v6744
  %v9852 = vpack.c.b16 %v6747, %v6746
  %v9853 = vpack.c.b16 %v6749, %v6748
  %v9854 = vpack.c.b16 %v6751, %v6750
  %v9855 = vpack.c.b16 %v6753, %v6752
  %v9856 = vpack.c.b16 %v6755, %v6754
  %v9857 = vpack.c.b16 %v6757, %v6756
  %v9858 = vpack.c.b16 %v6759, %v6758
  %v9859 = vpack.c.b16 %v6761, %v6760
  %v9860 = vpack.c.b16 %v6763, %v6762
  %v9861 = vpack.c.b16 %v6765, %v6764
  %v9862 = vpack.c.b16 %v6767, %v6766
  %v9863 = vpack.c.b16 %v6769, %v6768
  %v9864 = vpack.c.b16 %v6771, %v6770
  %v9865 = vpack.c.b16 %v6773, %v6772
  %v9866 = vpack.c.b16 %v6775, %v6774
  %v9867 = vpack.c.b16 %v6777, %v6776
  %v9868 = vpack.c.b16 %v6779, %v6778
  %v9869 = vpack.c.b16 %v6781, %v6780
  %v9870 = vpack.c.b16 %v6783, %v6782
  %v9871 = vpack.c.b16 %v6785, %v6784
  %v9872 = vpack.c.b16 %v6787, %v6786
  %v9873 = vpack.c.b16 %v6789, %v6788
  %v9874 = vpack.c.b16 %v6791, %v6790
  %v9875 = vpack.c.b16 %v6793, %v6792
  %v9876 = vpack.c.b16 %v6795, %v6794
  %v9877 = vpack.c.b16 %v6797, %v6796
  %v9878 = vpack.c.b16 %v6799, %v6798
  %v9879 = vpack.c.b16 %v6801, %v6800
  %v9880 = vpack.c.b16 %v6803, %v6802
  %v9881 = vpack.c.b16 %v6805, %v6804
  %v9882 = vpack.c.b16 %v6807, %v6806
  %v9883 = vpack.c.b16 %v6809, %v6808
  %v9884 = vpack.c.b16 %v6811, %v6810
  %v9885 = vpack.c.b16 %v6813, %v6812
  %v9886 = vpack.c.b16 %v6815, %v6814
  %v9887 = vpack.c.b16 %v6817, %v6816
  %v9888 = vpack.c.b16 %v6819, %v6818
  %v9889 = vpack.c.b16 %v6821, %v6820
  %v9890 = vpack.c.b16 %v6823, %v6822
  %v9891 = vpack.c.b16 %v6825, %v6824
  %v9892 = vpack.c.b16 %v6827, %v6826
  %v9893 = vpack.c.b16 %v6829, %v6828
  %v9894 = vpack.c.b16 %v6831, %v6830
  %v9895 = vpack.c.b16 %v6833, %v6832
  %v9896 = vpack.c.b16 %v6835, %v6834
  %v9897 = vpack.c.b16 %v6837, %v6836
  %v9898 = vpack.c.b16 %v6839, %v6838
  %v9899 = vpack.c.b16 %v6841, %v6840
  %v9900 = vpack.c.b16 %v6843, %v6842
  %v9901 = vpack.c.b16 %v6845, %v6844
  %v9902 = vpack.c.b16 %v6847, %v6846
  %v9903 = vpack.c.b16 %v6849, %v6848
  %v9904 = vpack.c.b16 %v6851, %v6850
  %v9905 = vpack.c.b16 %v6853, %v6852
  %v9906 = vpack.c.b16 %v6855, %v6854
  %v9907 = vpack.c.b16 %v6857, %v6856
  %v9908 = vpack.c.b16 %v6859, %v6858
  %v9909 = vpack.c.b16 %v6861, %v6860
  %v9910 = vpack.c.b16 %v6863, %v6862
  %v9911 = vpack.c.b16 %v6865, %v6864
  %v9912 = vpack.c.b16 %v6867, %v6866
  %v9913 = vpack.c.b16 %v6869, %v6868
  %v9914 = vpack.c.b16 %v6871, %v6870
  %v9915 = vpack.c.b16 %v6873, %v6872
  %v9916 = vpack.c.b16 %v6875, %v6874
  %v9917 = vpack.c.b16 %v6877, %v6876
  %v9918 = vpack.c.b16 %v6879, %v6878
  %v9919 = vpack.c.b16 %v6881, %v6880
  %v9920 = vpack.c.b16 %v6883, %v6882
  %v9921 = vpack.c.b16 %v6885, %v6884
  %v9922 = vpack.c.b16 %v6887, %v6886
  %v9923 = vpack.c.b16 %v6889, %v6888
  %v9924 = vpack.c.b16 %v6891, %v6890
  %v9925 = vpack.c.b16 %v6893, %v6892
  %v9926 = vpack.c.b16 %v6895, %v6894
  %v9927 = vpack.c.b16 %v6897, %v6896
  %v9928 = vpack.c.b16 %v6899, %v6898
  %v9929 = vpack.c.b16 %v6901, %v6900
  %v9930 = vpack.c.b16 %v6903, %v6902
  %v9931 = vpack.c.b16 %v6905, %v6904
  %v9932 = vpack.c.b16 %v6907, %v6906
  %v9933 = vpack.c.b16 %v6909, %v6908
  %v9934 = vpack.c.b16 %v6911, %v6910
  %v9935 = vpack.c.b16 %v6913, %v6912
  %v9936 = vpack.c.b16 %v6915, %v6914
  %v9937 = vpack.c.b16 %v6917, %v6916
  %v9938 = vpack.c.b16 %v6919, %v6918
  %v9939 = vpack.c.b16 %v6921, %v6920
  %v9940 = vpack.c.b16 %v6923, %v6922
  %v9941 = vpack.c.b16 %v6925, %v6924
  %v9942 = vpack.c.b16 %v6927, %v6926
  %v9943 = vpack.c.b16 %v6929, %v6928
  %v9944 = vpack.c.b16 %v6931, %v6930
  %v9945 = vpack.c.b16 %v6933, %v6932
  %v9946 = vpack.c.b16 %v6935, %v6934
  %v9947 = vpack.c.b16 %v6937, %v6936
  %v9948 = vpack.c.b16 %v6939, %v6938
  %v9949 = vpack.c.b16 %v6941, %v6940
  %v9950 = vpack.c.b16 %v6943, %v6942
  %v9951 = vpack.c.b16 %v6945, %v6944
  %v9952 = vpack.c.b16 %v6947, %v6946
  %v9953 = vpack.c.b16 %v6949, %v6948
  %v9954 = vpack.c.b16 %v6951, %v6950
  %v9955 = vpack.c.b16 %v6953, %v6952
  %v9956 = vpack.c.b16 %v6955, %v6954
  %v9957 = vpack.c.b16 %v6957, %v6956
  %v9958 = vpack.c.b16 %v6959, %v6958
  %v9959 = vpack.c.b16 %v6961, %v6960
  %v9960 = vpack.c.b16 %v6963, %v6962
  %v9961 = vpack.c.b16 %v6965, %v6964
  %v9962 = vpack.c.b16 %v6967, %v6966
  %v9963 = vpack.c.b16 %v6969, %v6968
  %v9964 = vpack.c.b16 %v6971, %v6970
  %v9965 = vpack.c.b16 %v6973, %v6972
  %v9966 = vpack.c.b16 %v6975, %v6974
  %v9967 = vpack.c.b16 %v6977, %v6976
  %v9968 = vpack.c.b16 %v6979, %v6978
  %v9969 = vpack.c.b16 %v6981, %v6980
  %v9970 = vpack.c.b16 %v6983, %v6982
  %v9971 = vpack.c.b16 %v6985, %v6984
  %v9972 = vpack.c.b16 %v6987, %v6986
  %v9973 = vpack.c.b16 %v6989, %v6988
  %v9974 = vpack.c.b16 %v6991, %v6990
  %v9975 = vpack.c.b16 %v6993, %v6992
  %v9976 = vpack.c.b16 %v6995, %v6994
  %v9977 = vpack.c.b16 %v6997, %v6996
  %v9978 = vpack.c.b16 %v6999, %v6998
  %v9979 = vpack.c.b16 %v7001, %v7000
  %v9980 = vpack.c.b16 %v7003, %v7002
  %v9981 = vpack.c.b16 %v7005, %v7004
  %v9982 = vpack.c.b16 %v7007, %v7006
  %v9983 = vpack.c.b16 %v7009, %v7008
  %v9984 = vpack.c.b16 %v7011, %v7010
  %v9985 = vpack.c.b16 %v7013, %v7012
  %v9986 = vpack.c.b16 %v7015, %v7014
  %v9987 = vpack.c.b16 %v7017, %v7016
  %v9988 = vpack.c.b16 %v7019, %v7018
  %v9989 = vpack.c.b16 %v7021, %v7020
  %v9990 = vpack.c.b16 %v7023, %v7022
  %v9991 = vpack.c.b16 %v7025, %v7024
  %v9992 = vpack.c.b16 %v7027, %v7026
  %v9993 = vpack.c.b16 %v7029, %v7028
  %v9994 = vpack.c.b16 %v7031, %v7030
  %v9995 = vpack.c.b16 %v7033, %v7032
  %v9996 = vpack.c.b16 %v7035, %v7034
  %v9997 = vpack.c.b16 %v7037, %v7036
  %v9998 = vpack.c.b16 %v7039, %v7038
  %v9999 = vpack.c.b16 %v7041, %v7040
  %v10000 = vpack.c.b16 %v7043, %v7042
  %v10001 = vpack.c.b16 %v7045, %v7044
  %v10002 = vpack.c.b16 %v7047, %v7046
  %v10003 = vpack.c.b16 %v7049, %v7048
  %v10004 = vpack.c.b16 %v7051, %v7050
  %v10005 = vpack.c.b16 %v7053, %v7052
  %v10006 = vpack.c.b16 %v7055, %v7054
  %v10007 = vpack.c.b16 %v7057, %v7056
  %v10008 = vpack.c.b16 %v7059, %v7058
  %v10009 = vpack.c.b16 %v7061, %v7060
  %v10010 = vpack.c.b16 %v7063, %v7062
  %v10011 = vpack.c.b16 %v7065, %v7064
  %v10012 = vpack.c.b16 %v7067, %v7066
  %v10013 = vpack.c.b16 %v7069, %v7068
  %v10014 = vpack.c.b16 %v7071, %v7070
  %v10015 = vpack.c.b16 %v7073, %v7072
  %v10016 = vpack.c.b16 %v7075, %v7074
  %v10017 = vpack.c.b16 %v7077, %v7076
  %v10018 = vpack.c.b16 %v7079, %v7078
  %v10019 = vpack.c.b16 %v7081, %v7080
  %v10020 = vpack.c.b16 %v7083, %v7082
  %v10021 = vpack.c.b16 %v7085, %v7084
  %v10022 = vpack.c.b16 %v7087, %v7086
  %v10023 = vpack.c.b16 %v7089, %v7088
  %v10024 = vpack.c.b16 %v7091, %v7090
  %v10025 = vpack.c.b16 %v7093, %v7092
  %v10026 = vpack.c.b16 %v7095, %v7094
  %v10027 = vpack.c.b16 %v7097, %v7096
  %v10028 = vpack.c.b16 %v7099, %v7098
  %v10029 = vpack.c.b16 %v7101, %v7100
  %v10030 = vpack.c.b16 %v7103, %v7102
  %v10031 = vpack.c.b16 %v7105, %v7104
  %v10032 = vpack.c.b16 %v7107, %v7106
  %v10033 = vpack.c.b16 %v7109, %v7108
  %v10034 = vpack.c.b16 %v7111, %v7110
  %v10035 = vpack.c.b16 %v7113, %v7112
  %v10036 = vpack.c.b16 %v7115, %v7114
  %v10037 = vpack.c.b16 %v7117, %v7116
  %v10038 = vpack.c.b16 %v7119, %v7118
  %v10039 = vpack.c.b16 %v7121, %v7120
  %v10040 = vpack.c.b16 %v7123, %v7122
  %v10041 = vpack.c.b16 %v7125, %v7124
  %v10042 = vpack.c.b16 %v7127, %v7126
  %v10043 = vpack.c.b16 %v7129, %v7128
  %v10044 = vpack.c.b16 %v7131, %v7130
  %v10045 = vpack.c.b16 %v7133, %v7132
  %v10046 = vpack.c.b16 %v7135, %v7134
  %v10047 = vpack.c.b16 %v7137, %v7136
  %v10048 = vpack.c.b16 %v7139, %v7138
  %v10049 = vpack.c.b16 %v7141, %v7140
  %v10050 = vpack.c.b16 %v7143, %v7142
  %v10051 = vpack.c.b16 %v7145, %v7144
  %v10052 = vpack.c.b16 %v7147, %v7146
  %v10053 = vpack.c.b16 %v7149, %v7148
  %v10054 = vpack.c.b16 %v7151, %v7150
  %v10055 = vpack.c.b16 %v7153, %v7152
  %v10056 = vpack.c.b16 %v7155, %v7154
  %v10057 = vpack.c.b16 %v7157, %v7156
  %v10058 = vpack.c.b16 %v7159, %v7158
  %v10059 = vpack.c.b16 %v7161, %v7160
  %v10060 = vpack.c.b16 %v7163, %v7162
  %v10061 = vpack.c.b16 %v7165, %v7164
  %v10062 = vpack.c.b16 %v7167, %v7166
  %v10063 = vpack.c.b16 %v7169, %v7168
  %v10064 = vpack.c.b16 %v7171, %v7170
  %v10065 = vpack.c.b16 %v7173, %v7172
  %v10066 = vpack.c.b16 %v7175, %v7174
  %v10067 = vpack.c.b16 %v7177, %v7176
  %v10068 = vpack.c.b16 %v7179, %v7178
  %v10069 = vpack.c.b16 %v7181, %v7180
  %v10070 = vpack.c.b16 %v7183, %v7182
  %v10071 = vpack.c.b16 %v7185, %v7184
  %v10072 = vpack.c.b16 %v7187, %v7186
  %v10073 = vpack.c.b16 %v7189, %v7188
  %v10074 = vpack.c.b16 %v7191, %v7190
  %v10075 = vpack.c.b16 %v7193, %v7192
  %v10076 = vpack.c.b16 %v7195, %v7194
  %v10077 = vpack.c.b16 %v7197, %v7196
  %v10078 = vpack.c.b16 %v7199, %v7198
  %v10079 = vpack.c.b16 %v7201, %v7200
  %v10080 = vpack.c.b16 %v7203, %v7202
  %v10081 = vpack.c.b16 %v7205, %v7204
  %v10082 = vpack.c.b16 %v7207, %v7206
  %v10083 = vpack.c.b16 %v7209, %v7208
  %v10084 = vpack.c.b16 %v7211, %v7210
  %v10085 = vpack.c.b16 %v7213, %v7212
  %v10086 = vpack.c.b16 %v7215, %v7214
  %v10087 = vpack.c.b16 %v7217, %v7216
  %v10088 = vpack.c.b16 %v7219, %v7218
  %v10089 = vpack.c.b16 %v7221, %v7220
  %v10090 = vpack.c.b16 %v7223, %v7222
  %v10091 = vpack.c.b16 %v7225, %v7224
  %v10092 = vpack.c.b16 %v7227, %v7226
  %v10093 = vpack.c.b16 %v7229, %v7228
  %v10094 = vpack.c.b16 %v7231, %v7230
  %v10095 = vpack.c.b16 %v7233, %v7232
  %v10096 = vpack.c.b16 %v7235, %v7234
  %v10097 = vpack.c.b16 %v7237, %v7236
  %v10098 = vpack.c.b16 %v7239, %v7238
  %v10099 = vpack.c.b16 %v7241, %v7240
  %v10100 = vpack.c.b16 %v7243, %v7242
  %v10101 = vpack.c.b16 %v7245, %v7244
  %v10102 = vpack.c.b16 %v7247, %v7246
  %v10103 = vpack.c.b16 %v7249, %v7248
  %v10104 = vpack.c.b16 %v7251, %v7250
  %v10105 = vpack.c.b16 %v7253, %v7252
  %v10106 = vpack.c.b16 %v7255, %v7254
  %v10107 = vpack.c.b16 %v7257, %v7256
  %v10108 = vpack.c.b16 %v7259, %v7258
  %v10109 = vpack.c.b16 %v7261, %v7260
  %v10110 = vpack.c.b16 %v7263, %v7262
  %v10111 = vpack.c.b16 %v7265, %v7264
  %v10112 = vpack.c.b16 %v7267, %v7266
  %v10113 = vpack.c.b16 %v7269, %v7268
  %v10114 = vpack.c.b16 %v7271, %v7270
  %v10115 = vpack.c.b16 %v7273, %v7272
  %v10116 = vpack.c.b16 %v7275, %v7274
  %v10117 = vpack.c.b16 %v7277, %v7276
  %v10118 = vpack.c.b16 %v7279, %v7278
  %v10119 = vpack.c.b16 %v7281, %v7280
  %v10120 = vpack.c.b16 %v7283, %v7282
  %v10121 = vpack.c.b16 %v7285, %v7284
  %v10122 = vpack.c.b16 %v7287, %v7286
  %v10123 = vpack.c.b16 %v7289, %v7288
  %v10124 = vpack.c.b16 %v7291, %v7290
  %v10125 = vpack.c.b16 %v7293, %v7292
  %v10126 = vpack.c.b16 %v7295, %v7294
  %v10127 = vpack.c.b16 %v7297, %v7296
  %v10128 = vpack.c.b16 %v7299, %v7298
  %v10129 = vpack.c.b16 %v7301, %v7300
  %v10130 = vpack.c.b16 %v7303, %v7302
  %v10131 = vpack.c.b16 %v7305, %v7304
  %v10132 = vpack.c.b16 %v7307, %v7306
  %v10133 = vpack.c.b16 %v7309, %v7308
  %v10134 = vpack.c.b16 %v7311, %v7310
  %v10135 = vpack.c.b16 %v7313, %v7312
  %v10136 = vpack.c.b16 %v7315, %v7314
  %v10137 = vpack.c.b16 %v7317, %v7316
  %v10138 = vpack.c.b16 %v7319, %v7318
  %v10139 = vpack.c.b16 %v7321, %v7320
  %v10140 = vpack.c.b16 %v7323, %v7322
  %v10141 = vpack.c.b16 %v7325, %v7324
  %v10142 = vpack.c.b16 %v7327, %v7326
  %v10143 = vpack.c.b16 %v7329, %v7328
  %v10144 = vpack.c.b16 %v7331, %v7330
  %v10145 = vpack.c.b16 %v7333, %v7332
  %v10146 = vpack.c.b16 %v7335, %v7334
  %v10147 = vpack.c.b16 %v7337, %v7336
  %v10148 = vpack.c.b16 %v7339, %v7338
  %v10149 = vpack.c.b16 %v7341, %v7340
  %v10150 = vpack.c.b16 %v7343, %v7342
  %v10151 = vpack.c.b16 %v7345, %v7344
  %v10152 = vpack.c.b16 %v7347, %v7346
  %v10153 = vpack.c.b16 %v7349, %v7348
  %v10154 = vpack.c.b16 %v7351, %v7350
  %v10155 = vpack.c.b16 %v7353, %v7352
  %v10156 = vpack.c.b16 %v7355, %v7354
  %v10157 = vpack.c.b16 %v7357, %v7356
  %v10158 = vpack.c.b16 %v7359, %v7358
  %v10159 = vpack.c.b16 %v7361, %v7360
  %v10160 = vpack.c.b16 %v7363, %v7362
  %v10161 = vpack.c.b16 %v7365, %v7364
  %v10162 = vpack.c.b16 %v7367, %v7366
  %v10163 = vpack.c.b16 %v7369, %v7368
  %v10164 = vpack.c.b16 %v7371, %v7370
  %v10165 = vpack.c.b16 %v7373, %v7372
  %v10166 = vpack.c.b16 %v7375, %v7374
  %v10167 = vpack.c.b16 %v7377, %v7376
  %v10168 = vpack.c.b16 %v7379, %v7378
  %v10169 = vpack.c.b16 %v7381, %v7380
  %v10170 = vpack.c.b16 %v7383, %v7382
  %v10171 = vpack.c.b16 %v7385, %v7384
  %v10172 = vpack.c.b16 %v7387, %v7386
  %v10173 = vpack.c.b16 %v7389, %v7388
  %v10174 = vpack.c.b16 %v7391, %v7390
  %v10175 = vpack.c.b16 %v7393, %v7392
  %v10176 = vpack.c.b16 %v7395, %v7394
  %v10177 = vpack.c.b16 %v7397, %v7396
  %v10178 = vpack.c.b16 %v7399, %v7398
  %v10179 = vpack.c.b16 %v7401, %v7400
  %v10180 = vpack.c.b16 %v7403, %v7402
  %v10181 = vpack.c.b16 %v7405, %v7404
  %v10182 = vpack.c.b16 %v7407, %v7406
  %v10183 = vpack.c.b16 %v7409, %v7408
  %v10184 = vpack.c.b16 %v7411, %v7410
  %v10185 = vpack.c.b16 %v7413, %v7412
  %v10186 = vpack.c.b16 %v7415, %v7414
  %v10187 = vpack.c.b16 %v7417, %v7416
  %v10188 = vpack.c.b16 %v7419, %v7418
  %v10189 = vpack.c.b16 %v7421, %v7420
  %v10190 = vpack.c.b16 %v7423, %v7422
  %v10191 = vpack.c.b16 %v7425, %v7424
  %v10192 = vpack.c.b16 %v7427, %v7426
  %v10193 = vpack.c.b16 %v7429, %v7428
  %v10194 = vpack.c.b16 %v7431, %v7430
  %v10195 = vpack.c.b16 %v7433, %v7432
  %v10196 = vpack.c.b16 %v7435, %v7434
  %v10197 = vpack.c.b16 %v7437, %v7436
  %v10198 = vpack.c.b16 %v7439, %v7438
  %v10199 = vpack.c.b16 %v7441, %v7440
  %v10200 = vpack.c.b16 %v7443, %v7442
  %v10201 = vpack.c.b16 %v7445, %v7444
  %v10202 = vpack.c.b16 %v7447, %v7446
  %v10203 = vpack.c.b16 %v7449, %v7448
  %v10204 = vpack.c.b16 %v7451, %v7450
  %v10205 = vpack.c.b16 %v7453, %v7452
  %v10206 = vpack.c.b16 %v7455, %v7454
  %v10207 = vpack.c.b16 %v7457, %v7456
  %v10208 = vpack.c.b16 %v7459, %v7458
  %v10209 = vpack.c.b16 %v7461, %v7460
  %v10210 = vpack.c.b16 %v7463, %v7462
  %v10211 = vpack.c.b16 %v7465, %v7464
  %v10212 = vpack.c.b16 %v7467, %v7466
  %v10213 = vpack.c.b16 %v7469, %v7468
  %v10214 = vpack.c.b16 %v7471, %v7470
  %v10215 = vpack.c.b16 %v7473, %v7472
  %v10216 = vpack.c.b16 %v7475, %v7474
  %v10217 = vpack.c.b16 %v7477, %v7476
  %v10218 = vpack.c.b16 %v7479, %v7478
  %v10219 = vpack.c.b16 %v7481, %v7480
  %v10220 = vpack.c.b16 %v7483, %v7482
  %v10221 = vpack.c.b16 %v7485, %v7484
  %v10222 = vpack.c.b16 %v7487, %v7486
  %v10223 = vpack.c.b16 %v7489, %v7488
  %v10224 = vpack.c.b16 %v7491, %v7490
  %v10225 = vpack.c.b16 %v7493, %v7492
  %v10226 = vpack.c.b16 %v7495, %v7494
  %v10227 = vpack.c.b16 %v7497, %v7496
  %v10228 = vpack.c.b16 %v7499, %v7498
  %v10229 = vpack.c.b16 %v7501, %v7500
  %v10230 = vpack.c.b16 %v7503, %v7502
  %v10231 = vpack.c.b16 %v7505, %v7504
  %v10232 = vpack.c.b16 %v7507, %v7506
  %v10233 = vpack.c.b16 %v7509, %v7508
  %v10234 = vpack.c.b16 %v7511, %v7510
  %v10235 = vpack.c.b16 %v7513, %v7512
  %v10236 = vpack.c.b16 %v7515, %v7514
  %v10237 = vpack.c.b16 %v7517, %v7516
  %v10238 = vpack.c.b16 %v7519, %v7518
  %v10239 = vpack.c.b16 %v7521, %v7520
  %v10240 = vpack.c.b16 %v7523, %v7522
  %v10241 = vpack.c.b16 %v7525, %v7524
  %v10242 = vpack.c.b16 %v7527, %v7526
  %v10243 = vpack.c.b16 %v7529, %v7528
  %v10244 = vpack.c.b16 %v7531, %v7530
  %v10245 = vpack.c.b16 %v7533, %v7532
  %v10246 = vpack.c.b16 %v7535, %v7534
  %v10247 = vpack.c.b16 %v7537, %v7536
  %v10248 = vpack.c.b16 %v7539, %v7538
  %v10249 = vpack.c.b16 %v7541, %v7540
  %v10250 = vpack.c.b16 %v7543, %v7542
  %v10251 = vpack.c.b16 %v7545, %v7544
  %v10252 = vpack.c.b16 %v7547, %v7546
  %v10253 = vpack.c.b16 %v7549, %v7548
  %v10254 = vpack.c.b16 %v7551, %v7550
  %v10255 = vpack.c.b16 %v7553, %v7552
  %v10256 = vpack.c.b16 %v7555, %v7554
  %v10257 = vpack.c.b16 %v7557, %v7556
  %v10258 = vpack.c.b16 %v7559, %v7558
  %v10259 = vpack.c.b16 %v7561, %v7560
  %v10260 = vpack.c.b16 %v7563, %v7562
  %v10261 = vpack.c.b16 %v7565, %v7564
  %v10262 = vpack.c.b16 %v7567, %v7566
  %v10263 = vpack.c.b16 %v7569, %v7568
  %v10264 = vpack.c.b16 %v7571, %v7570
  %v10265 = vpack.c.b16 %v7573, %v7572
  %v10266 = vpack.c.b16 %v7575, %v7574
  %v10267 = vpack.c.b16 %v7577, %v7576
  %v10268 = vpack.c.b16 %v7579, %v7578
  %v10269 = vpack.c.b16 %v7581, %v7580
  %v10270 = vpack.c.b16 %v7583, %v7582
  %v10271 = vpack.c.b16 %v7585, %v7584
  %v10272 = vpack.c.b16 %v7587, %v7586
  %v10273 = vpack.c.b16 %v7589, %v7588
  %v10274 = vpack.c.b16 %v7591, %v7590
  %v10275 = vpack.c.b16 %v7593, %v7592
  %v10276 = vpack.c.b16 %v7595, %v7594
  %v10277 = vpack.c.b16 %v7597, %v7596
  %v10278 = vpack.c.b16 %v7599, %v7598
  %v10279 = vpack.c.b16 %v7601, %v7600
  %v10280 = vpack.c.b16 %v7603, %v7602
  %v10281 = vpack.c.b16 %v7605, %v7604
  %v10282 = vpack.c.b16 %v7607, %v7606
  %v10283 = vpack.c.b16 %v7609, %v7608
  %v10284 = vpack.c.b16 %v7611, %v7610
  %v10285 = vpack.c.b16 %v7613, %v7612
  %v10286 = vpack.c.b16 %v7615, %v7614
  %v10287 = vpack.c.b16 %v7617, %v7616
  %v10288 = vpack.c.b16 %v7619, %v7618
  %v10289 = vpack.c.b16 %v7621, %v7620
  %v10290 = vpack.c.b16 %v7623, %v7622
  %v10291 = vpack.c.b16 %v7625, %v7624
  %v10292 = vpack.c.b16 %v7627, %v7626
  %v10293 = vpack.c.b16 %v7629, %v7628
  %v10294 = vpack.c.b16 %v7631, %v7630
  %v10295 = vpack.c.b16 %v7633, %v7632
  %v10296 = vpack.c.b16 %v7635, %v7634
  %v10297 = vpack.c.b16 %v7637, %v7636
  %v10298 = vpack.c.b16 %v7639, %v7638
  %v10299 = vpack.c.b16 %v7641, %v7640
  %v10300 = vpack.c.b16 %v7643, %v7642
  %v10301 = vpack.c.b16 %v7645, %v7644
  %v10302 = vpack.c.b16 %v7647, %v7646
  %v10303 = vpack.c.b16 %v7649, %v7648
  %v10304 = vpack.c.b16 %v7651, %v7650
  %v10305 = vpack.c.b16 %v7653, %v7652
  %v10306 = vpack.c.b16 %v7655, %v7654
  %v10307 = vpack.c.b16 %v7657, %v7656
  %v10308 = vpack.c.b16 %v7659, %v7658
  %v10309 = vpack.c.b16 %v7661, %v7660
  %v10310 = vpack.c.b16 %v7663, %v7662
  %v10311 = vpack.c.b16 %v7665, %v7664
  %v10312 = vpack.c.b16 %v7667, %v7666
  %v10313 = vpack.c.b16 %v7669, %v7668
  %v10314 = vpack.c.b16 %v7671, %v7670
  %v10315 = vpack.c.b16 %v7673, %v7672
  %v10316 = vpack.c.b16 %v7675, %v7674
  %v10317 = vpack.c.b16 %v7677, %v7676
  %v10318 = vpack.c.b16 %v7679, %v7678
  %v10319 = vpack.c.b16 %v7681, %v7680
  %v10320 = vpack.c.b16 %v7683, %v7682
  %v10321 = vpack.c.b16 %v7685, %v7684
  %v10322 = vpack.c.b16 %v7687, %v7686
  %v10323 = vpack.c.b16 %v7689, %v7688
  %v10324 = vpack.c.b16 %v7691, %v7690
  %v10325 = vpack.c.b16 %v7693, %v7692
  %v10326 = vpack.c.b16 %v7695, %v7694
  %v10327 = vpack.c.b16 %v7697, %v7696
  %v10328 = vpack.c.b16 %v7699, %v7698
  %v10329 = vpack.c.b16 %v7701, %v7700
  %v10330 = vpack.c.b16 %v7703, %v7702
  %v10331 = vpack.c.b16 %v7705, %v7704
  %v10332 = vpack.c.b16 %v7707, %v7706
  %v10333 = vpack.c.b16 %v7709, %v7708
  %v10334 = vpack.c.b16 %v7711, %v7710
  %v10335 = vpack.c.b16 %v7713, %v7712
  %v10336 = vpack.c.b16 %v7715, %v7714
  %v10337 = vpack.c.b16 %v7717, %v7716
  %v10338 = vpack.c.b16 %v7719, %v7718
  %v10339 = vpack.c.b16 %v7721, %v7720
  %v10340 = vpack.c.b16 %v7723, %v7722
  %v10341 = vpack.c.b16 %v7725, %v7724
  %v10342 = vpack.c.b16 %v7727, %v7726
  %v10343 = vpack.c.b16 %v7729, %v7728
  %v10344 = vpack.c.b16 %v7731, %v7730
  %v10345 = vpack.c.b16 %v7733, %v7732
  %v10346 = vpack.c.b16 %v7735, %v7734
  %v10347 = vpack.c.b16 %v7737, %v7736
  %v10348 = vpack.c.b16 %v7739, %v7738
  %v10349 = vpack.c.b16 %v7741, %v7740
  %v10350 = vpack.c.b16 %v7743, %v7742
  %v10351 = vpack.c.b16 %v7745, %v7744
  %v10352 = vpack.c.b16 %v7747, %v7746
  %v10353 = vpack.c.b16 %v7749, %v7748
  %v10354 = vpack.c.b16 %v7751, %v7750
  %v10355 = vpack.c.b16 %v7753, %v7752
  %v10356 = vpack.c.b16 %v7755, %v7754
  %v10357 = vpack.c.b16 %v7757, %v7756
  %v10358 = vpack.c.b16 %v7759, %v7758
  %v10359 = vpack.c.b16 %v7761, %v7760
  %v10360 = vpack.c.b16 %v7763, %v7762
  %v10361 = vpack.c.b16 %v7765, %v7764
  %v10362 = vpack.c.b16 %v7767, %v7766
  %v10363 = vpack.c.b16 %v7769, %v7768
  %v10364 = vpack.c.b16 %v7771, %v7770
  %v10365 = vpack.c.b16 %v7773, %v7772
  %v10366 = vpack.c.b16 %v7775, %v7774
  %v10367 = vpack.c.b16 %v7777, %v7776
  %v10368 = vpack.c.b16 %v7779, %v7778
  %v10369 = vpack.c.b16 %v7781, %v7780
  %v10370 = vpack.c.b16 %v7783, %v7782
  %v10371 = vpack.c.b16 %v7785, %v7784
  %v10372 = vpack.c.b16 %v7787, %v7786
  %v10373 = vpack.c.b16 %v7789, %v7788
  %v10374 = vpack.c.b16 %v7791, %v7790
  %v10375 = vpack.c.b16 %v7793, %v7792
  %v10376 = vpack.c.b16 %v7795, %v7794
  %v10377 = vpack.c.b16 %v7797, %v7796
  %v10378 = vpack.c.b16 %v7799, %v7798
  %v10379 = vpack.c.b16 %v7801, %v7800
  %v10380 = vpack.c.b16 %v7803, %v7802
  %v10381 = vpack.c.b16 %v7805, %v7804
  %v10382 = vpack.c.b16 %v7807, %v7806
  %v10383 = vpack.c.b16 %v7809, %v7808
  %v10384 = vpack.c.b16 %v7811, %v7810
  %v10385 = vpack.c.b16 %v7813, %v7812
  %v10386 = vpack.c.b16 %v7815, %v7814
  %v10387 = vpack.c.b16 %v7817, %v7816
  %v10388 = vpack.c.b16 %v7819, %v7818
  %v10389 = vpack.c.b16 %v7821, %v7820
  %v10390 = vpack.c.b16 %v7823, %v7822
  %v10391 = vpack.c.b16 %v7825, %v7824
  %v10392 = vpack.c.b16 %v7827, %v7826
  %v10393 = vpack.c.b16 %v7829, %v7828
  %v10394 = vpack.c.b16 %v7831, %v7830
  %v10395 = vpack.c.b16 %v7833, %v7832
  %v10396 = vpack.c.b16 %v7835, %v7834
  %v10397 = vpack.c.b16 %v7837, %v7836
  %v10398 = vpack.c.b16 %v7839, %v7838
  %v10399 = vpack.c.b16 %v7841, %v7840
  %v10400 = vpack.c.b16 %v7843, %v7842
  %v10401 = vpack.c.b16 %v7845, %v7844
  %v10402 = vpack.c.b16 %v7847, %v7846
  %v10403 = vpack.c.b16 %v7849, %v7848
  %v10404 = vpack.c.b16 %v7851, %v7850
  %v10405 = vpack.c.b16 %v7853, %v7852
  %v10406 = vpack.c.b16 %v7855, %v7854
  %v10407 = vpack.c.b16 %v7857, %v7856
  %v10408 = vpack.c.b16 %v7859, %v7858
  %v10409 = vpack.c.b16 %v7861, %v7860
  %v10410 = vpack.c.b16 %v7863, %v7862
  %v10411 = vpack.c.b16 %v7865, %v7864
  %v10412 = vpack.c.b16 %v7867, %v7866
  %v10413 = vpack.c.b16 %v7869, %v7868
  %v10414 = vpack.c.b16 %v7871, %v7870
  %v10415 = vpack.c.b16 %v7873, %v7872
  %v10416 = vpack.c.b16 %v7875, %v7874
  %v10417 = vpack.c.b16 %v7877, %v7876
  %v10418 = vpack.c.b16 %v7879, %v7878
  %v10419 = vpack.c.b16 %v7881, %v7880
  %v10420 = vpack.c.b16 %v7883, %v7882
  %v10421 = vpack.c.b16 %v7885, %v7884
  %v10422 = vpack.c.b16 %v7887, %v7886
  %v10423 = vpack.c.b16 %v7889, %v7888
  %v10424 = vpack.c.b16 %v7891, %v7890
  %v10425 = vpack.c.b16 %v7893, %v7892
  %v10426 = vpack.c.b16 %v7895, %v7894
  %v10427 = vpack.c.b16 %v7897, %v7896
  %v10428 = vpack.c.b16 %v7899, %v7898
  %v10429 = vpack.c.b16 %v7901, %v7900
  %v10430 = vpack.c.b16 %v7903, %v7902
  %v10431 = vpack.c.b16 %v7905, %v7904
  %v10432 = vpack.c.b16 %v7907, %v7906
  %v10433 = vpack.c.b16 %v7909, %v7908
  %v10434 = vpack.c.b16 %v7911, %v7910
  %v10435 = vpack.c.b16 %v7913, %v7912
  %v10436 = vpack.c.b16 %v7915, %v7914
  %v10437 = vpack.c.b16 %v7917, %v7916
  %v10438 = vpack.c.b16 %v7919, %v7918
  %v10439 = vpack.c.b16 %v7921, %v7920
  %v10440 = vpack.c.b16 %v7923, %v7922
  %v10441 = vpack.c.b16 %v7925, %v7924
  %v10442 = vpack.c.b16 %v7927, %v7926
  %v10443 = vpack.c.b16 %v7929, %v7928
  %v10444 = vpack.c.b16 %v7931, %v7930
  %v10445 = vpack.c.b16 %v7933, %v7932
  %v10446 = vpack.c.b16 %v7935, %v7934
  %v10447 = vpack.c.b16 %v7937, %v7936
  %v10448 = vpack.c.b16 %v7939, %v7938
  %v10449 = vpack.c.b16 %v7941, %v7940
  %v10450 = vpack.c.b16 %v7943, %v7942
  %v10451 = vpack.c.b16 %v7945, %v7944
  %v10452 = vpack.c.b16 %v7947, %v7946
  %v10453 = vpack.c.b16 %v7949, %v7948
  %v10454 = vpack.c.b16 %v7951, %v7950
  %v10455 = vpack.c.b16 %v7953, %v7952
  %v10456 = vpack.c.b16 %v7955, %v7954
  %v10457 = vpack.c.b16 %v7957, %v7956
  %v10458 = vpack.c.b16 %v7959, %v7958
  %v10459 = vpack.c.b16 %v7961, %v7960
  %v10460 = vpack.c.b16 %v7963, %v7962
  %v10461 = vpack.c.b16 %v7965, %v7964
  %v10462 = vpack.c.b16 %v7967, %v7966
  %v10463 = vpack.c.b16 %v7969, %v7968
  %v10464 = vpack.c.b16 %v7971, %v7970
  %v10465 = vpack.c.b16 %v7973, %v7972
  %v10466 = vpack.c.b16 %v7975, %v7974
  %v10467 = vpack.c.b16 %v7977, %v7976
  %v10468 = vpack.c.b16 %v7979, %v7978
  %v10469 = vpack.c.b16 %v7981, %v7980
  %v10470 = vpack.c.b16 %v7983, %v7982
  %v10471 = vpack.c.b16 %v7985, %v7984
  %v10472 = vpack.c.b16 %v7987, %v7986
  %v10473 = vpack.c.b16 %v7989, %v7988
  %v10474 = vpack.c.b16 %v7991, %v7990
  %v10475 = vpack.c.b16 %v7993, %v7992
  %v10476 = vpack.c.b16 %v7995, %v7994
  %v10477 = vpack.c.b16 %v7997, %v7996
  %v10478 = vpack.c.b16 %v7999, %v7998
  %v10479 = vpack.c.b16 %v8001, %v8000
  %v10480 = vpack.c.b16 %v8003, %v8002
  %v10481 = vpack.c.b16 %v8005, %v8004
  %v10482 = vpack.c.b16 %v8007, %v8006
  %v10483 = vpack.c.b16 %v8009, %v8008
  %v10484 = vpack.c.b16 %v8011, %v8010
  %v10485 = vpack.c.b16 %v8013, %v8012
  %v10486 = vpack.c.b16 %v8015, %v8014
  %v10487 = vpack.c.b16 %v8017, %v8016
  %v10488 = vpack.c.b16 %v8019, %v8018
  %v10489 = vpack.c.b16 %v8021, %v8020
  %v10490 = vpack.c.b16 %v8023, %v8022
  %v10491 = vpack.c.b16 %v8025, %v8024
  %v10492 = vpack.c.b16 %v8027, %v8026
  %v10493 = vpack.c.b16 %v8029, %v8028
  %v10494 = vpack.c.b16 %v8031, %v8030
  %v10495 = vpack.c.b16 %v8033, %v8032
  %v10496 = vpack.c.b16 %v8035, %v8034
  %v10497 = vpack.c.b16 %v8037, %v8036
  %v10498 = vpack.c.b16 %v8039, %v8038
  %v10499 = vpack.c.b16 %v8041, %v8040
  %v10500 = vpack.c.b16 %v8043, %v8042
  %v10501 = vpack.c.b16 %v8045, %v8044
  %v10502 = vpack.c.b16 %v8047, %v8046
  %v10503 = vpack.c.b16 %v8049, %v8048
  %v10504 = vpack.c.b16 %v8051, %v8050
  %v10505 = vpack.c.b16 %v8053, %v8052
  %v10506 = vpack.c.b16 %v8055, %v8054
  %v10507 = vpack.c.b16 %v8057, %v8056
  %v10508 = vpack.c.b16 %v8059, %v8058
  %v10509 = vpack.c.b16 %v8061, %v8060
  %v10510 = vpack.c.b16 %v8063, %v8062
  %v10511 = vpack.c.b16 %v8065, %v8064
  %v10512 = vpack.c.b16 %v8067, %v8066
  %v10513 = vpack.c.b16 %v8069, %v8068
  %v10514 = vpack.c.b16 %v8071, %v8070
  %v10515 = vpack.c.b16 %v8073, %v8072
  %v10516 = vpack.c.b16 %v8075, %v8074
  %v10517 = vpack.c.b16 %v8077, %v8076
  %v10518 = vpack.c.b16 %v8079, %v8078
  %v10519 = vpack.c.b16 %v8081, %v8080
  %v10520 = vpack.c.b16 %v8083, %v8082
  %v10521 = vpack.c.b16 %v8085, %v8084
  %v10522 = vpack.c.b16 %v8087, %v8086
  %v10523 = vpack.c.b16 %v8089, %v8088
  %v10524 = vpack.c.b16 %v8091, %v8090
  %v10525 = vpack.c.b16 %v8093, %v8092
  %v10526 = vpack.c.b16 %v8095, %v8094
  %v10527 = vpack.c.b16 %v8097, %v8096
  %v10528 = vpack.c.b16 %v8099, %v8098
  %v10529 = vpack.c.b16 %v8101, %v8100
  %v10530 = vpack.c.b16 %v8103, %v8102
  %v10531 = vpack.c.b16 %v8105, %v8104
  %v10532 = vpack.c.b16 %v8107, %v8106
  %v10533 = vpack.c.b16 %v8109, %v8108
  %v10534 = vpack.c.b16 %v8111, %v8110
  %v10535 = vpack.c.b16 %v8113, %v8112
  %v10536 = vpack.c.b16 %v8115, %v8114
  %v10537 = vpack.c.b16 %v8117, %v8116
  %v10538 = vpack.c.b16 %v8119, %v8118
  %v10539 = vpack.c.b16 %v8121, %v8120
  %v10540 = vpack.c.b16 %v8123, %v8122
  %v10541 = vpack.c.b16 %v8125, %v8124
  %v10542 = vpack.c.b16 %v8127, %v8126
  %v10543 = vpack.c.b16 %v8129, %v8128
  %v10544 = vpack.c.b16 %v8131, %v8130
  %v10545 = vpack.c.b16 %v8133, %v8132
  %v10546 = vpack.c.b16 %v8135, %v8134
  %v10547 = vpack.c.b16 %v8137, %v8136
  %v10548 = vpack.c.b16 %v8139, %v8138
  %v10549 = vpack.c.b16 %v8141, %v8140
  %v10550 = vpack.c.b16 %v8143, %v8142
  %v10551 = vpack.c.b16 %v8145, %v8144
  %v10552 = vpack.c.b16 %v8147, %v8146
  %v10553 = vpack.c.b16 %v8149, %v8148
  %v10554 = vpack.c.b16 %v8151, %v8150
  %v10555 = vpack.c.b16 %v8153, %v8152
  %v10556 = vpack.c.b16 %v8155, %v8154
  %v10557 = vpack.c.b16 %v8157, %v8156
  %v10558 = vpack.c.b16 %v8159, %v8158
  %v10559 = vpack.c.b16 %v8161, %v8160
  %v10560 = vpack.c.b16 %v8163, %v8162
  %v10561 = vpack.c.b16 %v8165, %v8164
  %v10562 = vpack.c.b16 %v8167, %v8166
  %v10563 = vpack.c.b16 %v8169, %v8168
  %v10564 = vpack.c.b16 %v8171, %v8170
  %v10565 = vpack.c.b16 %v8173, %v8172
  %v10566 = vpack.c.b16 %v8175, %v8174
  %v10567 = vpack.c.b16 %v8177, %v8176
  %v10568 = vpack.c.b16 %v8179, %v8178
  %v10569 = vpack.c.b16 %v8181, %v8180
  %v10570 = vpack.c.b16 %v8183, %v8182
  %v10571 = vpack.c.b16 %v8185, %v8184
  %v10572 = vpack.c.b16 %v8187, %v8186
  %v10573 = vpack.c.b16 %v8189, %v8188
  %v10574 = vpack.c.b16 %v8191, %v8190
  %v10575 = vpack.c.b16 %v8193, %v8192
  %v10576 = vpack.c.b16 %v8195, %v8194
  %v10577 = vpack.c.b16 %v8197, %v8196
  %v10578 = vpack.c.b16 %v8199, %v8198
  %v10579 = vpack.c.b16 %v8201, %v8200
  %v10580 = vpack.c.b16 %v8203, %v8202
  %v10581 = vpack.c.b16 %v8205, %v8204
  %v10582 = vpack.c.b16 %v8207, %v8206
  %v10583 = vpack.c.b16 %v8209, %v8208
  %v10584 = vpack.c.b16 %v8211, %v8210
  %v10585 = vpack.c.b16 %v8213, %v8212
  %v10586 = vpack.c.b16 %v8215, %v8214
  %v10587 = vpack.c.b16 %v8217, %v8216
  %v10588 = vpack.c.b16 %v8219, %v8218
  %v10589 = vpack.c.b16 %v8221, %v8220
  %v10590 = vpack.c.b16 %v8223, %v8222
  %v10591 = vpack.c.b16 %v8225, %v8224
  %v10592 = vpack.c.b16 %v8227, %v8226
  %v10593 = vpack.c.b16 %v8229, %v8228
  %v10594 = vpack.c.b16 %v8231, %v8230
  %v10595 = vpack.c.b16 %v8233, %v8232
  %v10596 = vpack.c.b16 %v8235, %v8234
  %v10597 = vpack.c.b16 %v8237, %v8236
  %v10598 = vpack.c.b16 %v8239, %v8238
  %v10599 = vpack.c.b16 %v8241, %v8240
  %v10600 = vpack.c.b16 %v8243, %v8242
  %v10601 = vpack.c.b16 %v8245, %v8244
  %v10602 = vpack.c.b16 %v8247, %v8246
  %v10603 = vpack.c.b16 %v8249, %v8248
  %v10604 = vpack.c.b16 %v8251, %v8250
  %v10605 = vpack.c.b16 %v8253, %v8252
  %v10606 = vpack.c.b16 %v8255, %v8254
  %v10607 = vpack.c.b16 %v8257, %v8256
  %v10608 = vpack.c.b16 %v8259, %v8258
  %v10609 = vpack.c.b16 %v8261, %v8260
  %v10610 = vpack.c.b16 %v8263, %v8262
  %v10611 = vpack.c.b16 %v8265, %v8264
  %v10612 = vpack.c.b16 %v8267, %v8266
  %v10613 = vpack.c.b16 %v8269, %v8268
  %v10614 = vpack.c.b16 %v8271, %v8270
  %v10615 = vpack.c.b16 %v8273, %v8272
  %v10616 = vpack.c.b16 %v8275, %v8274
  %v10617 = vpack.c.b16 %v8277, %v8276
  %v10618 = vpack.c.b16 %v8279, %v8278
  %v10619 = vpack.c.b16 %v8281, %v8280
  %v10620 = vpack.c.b16 %v8283, %v8282
  %v10621 = vpack.c.b16 %v8285, %v8284
  %v10622 = vpack.c.b16 %v8287, %v8286
  %v10623 = vpack.c.b16 %v8289, %v8288
  %v10624 = vpack.c.b16 %v8291, %v8290
  %v10625 = vpack.c.b16 %v8293, %v8292
  %v10626 = vpack.c.b16 %v8295, %v8294
  %v10627 = vpack.c.b16 %v8297, %v8296
  %v10628 = vpack.c.b16 %v8299, %v8298
  %v10629 = vpack.c.b16 %v8301, %v8300
  %v10630 = vpack.c.b16 %v8303, %v8302
  %v10631 = vpack.c.b16 %v8305, %v8304
  %v10632 = vpack.c.b16 %v8307, %v8306
  %v10633 = vpack.c.b16 %v8309, %v8308
  %v10634 = vpack.c.b16 %v8311, %v8310
  %v10635 = vpack.c.b16 %v8313, %v8312
  %v10636 = vpack.c.b16 %v8315, %v8314
  %v10637 = vpack.c.b16 %v8317, %v8316
  %v10638 = vpack.c.b16 %v8319, %v8318
  %v10639 = vpack.c.b16 %v8321, %v8320
  %v10640 = vpack.c.b16 %v8323, %v8322
  %v10641 = vpack.c.b16 %v8325, %v8324
  %v10642 = vpack.c.b16 %v8327, %v8326
  %v10643 = vpack.c.b16 %v8329, %v8328
  %v10644 = vpack.c.b16 %v8331, %v8330
  %v10645 = vpack.c.b16 %v8333, %v8332
  %v10646 = vpack.c.b16 %v8335, %v8334
  %v10647 = vpack.c.b16 %v8337, %v8336
  %v10648 = vpack.c.b16 %v8339, %v8338
  %v10649 = vpack.c.b16 %v8341, %v8340
  %v10650 = vpack.c.b16 %v8343, %v8342
  %v10651 = vpack.c.b16 %v8345, %v8344
  %v10652 = vpack.c.b16 %v8347, %v8346
  %v10653 = vpack.c.b16 %v8349, %v8348
  %v10654 = vpack.c.b16 %v8351, %v8350
  %v10655 = vpack.c.b16 %v8353, %v8352
  %v10656 = vpack.c.b16 %v8355, %v8354
  %v10657 = vpack.c.b16 %v8357, %v8356
  %v10658 = vpack.c.b16 %v8359, %v8358
  %v10659 = vpack.c.b16 %v8361, %v8360
  %v10660 = vpack.c.b16 %v8363, %v8362
  %v10661 = vpack.c.b16 %v8365, %v8364
  %v10662 = vpack.c.b16 %v8367, %v8366
  %v10663 = vpack.c.b16 %v8369, %v8368
  %v10664 = vpack.c.b16 %v8371, %v8370
  %v10665 = vpack.c.b16 %v8373, %v8372
  %v10666 = vpack.c.b16 %v8375, %v8374
  %v10667 = vpack.c.b16 %v8377, %v8376
  %v10668 = vpack.c.b16 %v8379, %v8378
  %v10669 = vpack.c.b16 %v8381, %v8380
  %v10670 = vpack.c.b16 %v8383, %v8382
  %v10671 = vpack.c.b16 %v8385, %v8384
  %v10672 = vpack.c.b16 %v8387, %v8386
  %v10673 = vpack.c.b16 %v8389, %v8388
  %v10674 = vpack.c.b16 %v8391, %v8390
  %v10675 = vpack.c.b16 %v8393, %v8392
  %v10676 = vpack.c.b16 %v8395, %v8394
  %v10677 = vpack.c.b16 %v8397, %v8396
  %v10678 = vpack.c.b16 %v8399, %v8398
  %v10679 = vpack.c.b16 %v8401, %v8400
  %v10680 = vpack.c.b16 %v8403, %v8402
  %v10681 = vpack.c.b16 %v8405, %v8404
  %v10682 = vpack.c.b16 %v8407, %v8406
  %v10683 = vpack.c.b16 %v8409, %v8408
  %v10684 = vpack.c.b16 %v8411, %v8410
  %v10685 = vpack.c.b16 %v8413, %v8412
  %v10686 = vpack.c.b16 %v8415, %v8414
  %v10687 = vpack.c.b16 %v8417, %v8416
  %v10688 = vpack.c.b16 %v8419, %v8418
  %v10689 = vpack.c.b16 %v8421, %v8420
  %v10690 = vpack.c.b16 %v8423, %v8422
  %v10691 = vpack.c.b16 %v8425, %v8424
  %v10692 = vpack.c.b16 %v8427, %v8426
  %v10693 = vpack.c.b16 %v8429, %v8428
  %v10694 = vpack.c.b16 %v8431, %v8430
  %v10695 = vpack.c.b16 %v8433, %v8432
  %v10696 = vpack.c.b16 %v8435, %v8434
  %v10697 = vpack.c.b16 %v8437, %v8436
  %v10698 = vpack.c.b16 %v8439, %v8438
  %v10699 = vpack.c.b16 %v8441, %v8440
  %v10700 = vpack.c.b16 %v8443, %v8442
  %v10701 = vpack.c.b16 %v8445, %v8444
  %v10702 = vpack.c.b16 %v8447, %v8446
  %v10703 = vpack.c.b16 %v8449, %v8448
  %v10704 = vpack.c.b16 %v8451, %v8450
  %v10705 = vpack.c.b16 %v8453, %v8452
  %v10706 = vpack.c.b16 %v8455, %v8454
  %v10707 = vpack.c.b16 %v8457, %v8456
  %v10708 = vpack.c.b16 %v8459, %v8458
  %v10709 = vpack.c.b16 %v8461, %v8460
  %v10710 = vpack.c.b16 %v8463, %v8462
  %v10711 = vpack.c.b16 %v8465, %v8464
  %v10712 = vpack.c.b16 %v8467, %v8466
  %v10713 = vpack.c.b16 %v8469, %v8468
  %v10714 = vpack.c.b16 %v8471, %v8470
  %v10715 = vpack.c.b16 %v8473, %v8472
  %v10716 = vpack.c.b16 %v8475, %v8474
  %v10717 = vpack.c.b16 %v8477, %v8476
  %v10718 = vpack.c.b16 %v8479, %v8478
  %v10719 = vpack.c.b16 %v8481, %v8480
  %v10720 = vpack.c.b16 %v8483, %v8482
  %v10721 = vpack.c.b16 %v8485, %v8484
  %v10722 = vpack.c.b16 %v8487, %v8486
  %v10723 = vpack.c.b16 %v8489, %v8488
  %v10724 = vpack.c.b16 %v8491, %v8490
  %v10725 = vpack.c.b16 %v8493, %v8492
  %v10726 = vpack.c.b16 %v8495, %v8494
  %v10727 = vpack.c.b16 %v8497, %v8496
  %v10728 = vpack.c.b16 %v8499, %v8498
  %v10729 = vpack.c.b16 %v8501, %v8500
  %v10730 = vpack.c.b16 %v8503, %v8502
  %v10731 = vpack.c.b16 %v8505, %v8504
  %v10732 = vpack.c.b16 %v8507, %v8506
  %v10733 = vpack.c.b16 %v8509, %v8508
  %v10734 = vpack.c.b16 %v8511, %v8510
  %v10735 = vpack.c.b16 %v8513, %v8512
  %v10736 = vpack.c.b16 %v8515, %v8514
  %v10737 = vpack.c.b16 %v8517, %v8516
  %v10738 = vpack.c.b16 %v8519, %v8518
  %v10739 = vpack.c.b16 %v8521, %v8520
  %v10740 = vpack.c.b16 %v8523, %v8522
  %v10741 = vpack.c.b16 %v8525, %v8524
  %v10742 = vpack.c.b16 %v8527, %v8526
  %v10743 = vpack.c.b16 %v8529, %v8528
  %v10744 = vpack.c.b16 %v8531, %v8530
  %v10745 = vpack.c.b16 %v8533, %v8532
  %v10746 = vpack.c.b16 %v8535, %v8534
  %v10747 = vpack.c.b16 %v8537, %v8536
  %v10748 = vpack.c.b16 %v8539, %v8538
  %v10749 = vpack.c.b16 %v8541, %v8540
  %v10750 = vpack.c.b16 %v8543, %v8542
  %v10751 = vpack.c.b16 %v8545, %v8544
  %v10752 = vpack.c.b16 %v8547, %v8546
  %v10753 = vpack.c.b16 %v8549, %v8548
  %v10754 = vpack.c.b16 %v8551, %v8550
  %v10755 = vpack.c.b16 %v8553, %v8552
  %v10756 = vpack.c.b16 %v8555, %v8554
  %v10757 = vpack.c.b16 %v8557, %v8556
  %v10758 = vpack.c.b16 %v8559, %v8558
  %v10759 = vpack.c.b16 %v8561, %v8560
  %v10760 = vpack.c.b16 %v8563, %v8562
  %v10761 = vpack.c.b16 %v8565, %v8564
  %v10762 = vpack.c.b16 %v8567, %v8566
  %v10763 = vpack.c.b16 %v8569, %v8568
  %v10764 = vpack.c.b16 %v8571, %v8570
  %v10765 = vpack.c.b16 %v8573, %v8572
  %v10766 = vpack.c.b16 %v8575, %v8574
  %v10767 = vpack.c.b16 %v8577, %v8576
  %v10768 = vpack.c.b16 %v8579, %v8578
  %v10769 = vpack.c.b16 %v8581, %v8580
  %v10770 = vpack.c.b16 %v8583, %v8582
  %v10771 = vpack.c.b16 %v8585, %v8584
  %v10772 = vpack.c.b16 %v8587, %v8586
  %v10773 = vpack.c.b16 %v8589, %v8588
  %v10774 = vpack.c.b16 %v8591, %v8590
  %v10775 = vpack.c.b16 %v8593, %v8592
  %v10776 = vpack.c.b16 %v8595, %v8594
  %v10777 = vpack.c.b16 %v8597, %v8596
  %v10778 = vpack.c.b16 %v8599, %v8598
  %v10779 = vpack.c.b16 %v8601, %v8600
  %v10780 = vpack.c.b16 %v8603, %v8602
  %v10781 = vpack.c.b16 %v8605, %v8604
  %v10782 = vpack.c.b16 %v8607, %v8606
  %v10783 = vpack.c.b16 %v8609, %v8608
  %v10784 = vpack.c.b16 %v8611, %v8610
  %v10785 = vpack.c.b16 %v8613, %v8612
  %v10786 = vpack.c.b16 %v8615, %v8614
  %v10787 = vpack.c.b16 %v8617, %v8616
  %v10788 = vpack.c.b16 %v8619, %v8618
  %v10789 = vpack.c.b16 %v8621, %v8620
  %v10790 = vpack.c.b16 %v8623, %v8622
  %v10791 = vpack.c.b16 %v8625, %v8624
  %v10792 = vpack.c.b16 %v8627, %v8626
  %v10793 = vpack.c.b16 %v8629, %v8628
  %v10794 = vpack.c.b16 %v8631, %v8630
  %v10795 = vpack.c.b16 %v8633, %v8632
  %v10796 = vpack.c.b16 %v8635, %v8634
  %v10797 = vpack.c.b16 %v8637, %v8636
  %v10798 = vpack.c.b16 %v8639, %v8638
  %v10799 = vpack.c.b16 %v8641, %v8640
  %v10800 = vpack.c.b16 %v8643, %v8642
  %v10801 = vpack.c.b16 %v8645, %v8644
  %v10802 = vpack.c.b16 %v8647, %v8646
  %v10803 = vpack.c.b16 %v8649, %v8648
  %v10804 = vpack.c.b16 %v8651, %v8650
  %v10805 = vpack.c.b16 %v8653, %v8652
  %v10806 = vpack.c.b16 %v8655, %v8654
  %v10807 = vpack.c.b16 %v8657, %v8656
  %v10808 = vpack.c.b16 %v8659, %v8658
  %v10809 = vpack.c.b16 %v8661, %v8660
  %v10810 = vpack.c.b16 %v8663, %v8662
  %v10811 = vpack.c.b16 %v8665, %v8664
  %v10812 = vpack.c.b16 %v8667, %v8666
  %v10813 = vpack.c.b16 %v8669, %v8668
  %v10814 = vpack.c.b16 %v8671, %v8670
  %v10815 = vpack.c.b16 %v8673, %v8672
  %v10816 = vpack.c.b16 %v8675, %v8674
  %v10817 = vpack.c.b16 %v8677, %v8676
  %v10818 = vpack.c.b16 %v8679, %v8678
  %v10819 = vpack.c.b16 %v8681, %v8680
  %v10820 = vpack.c.b16 %v8683, %v8682
  %v10821 = vpack.c.b16 %v8685, %v8684
  %v10822 = vpack.c.b16 %v8687, %v8686
  %v10823 = vpack.c.b16 %v8689, %v8688
  %v10824 = vpack.c.b16 %v8691, %v8690
  %v10825 = vpack.c.b16 %v8693, %v8692
  %v10826 = vpack.c.b16 %v8695, %v8694
  %v10827 = vpack.c.b16 %v8697, %v8696
  %v10828 = vpack.c.b16 %v8699, %v8698
  %v10829 = vpack.c.b16 %v8701, %v8700
  %v10830 = vpack.c.b16 %v8703, %v8702
  %v10831 = vpack.c.b16 %v8705, %v8704
  %v10832 = vpack.c.b16 %v8707, %v8706
  %v10833 = vpack.c.b16 %v8709, %v8708
  %v10834 = vpack.c.b16 %v8711, %v8710
  %v10835 = vpack.c.b16 %v8713, %v8712
  %v10836 = vpack.c.b16 %v8715, %v8714
  %v10837 = vpack.c.b16 %v8717, %v8716
  %v10838 = vpack.c.b16 %v8719, %v8718
  %v10839 = vpack.c.b16 %v8721, %v8720
  %v10840 = vpack.c.b16 %v8723, %v8722
  %v10841 = vpack.c.b16 %v8725, %v8724
  %v10842 = vpack.c.b16 %v8727, %v8726
  %v10843 = vpack.c.b16 %v8729, %v8728
  %v10844 = vpack.c.b16 %v8731, %v8730
  %v10845 = vpack.c.b16 %v8733, %v8732
  %v10846 = vpack.c.b16 %v8735, %v8734
  %v10847 = vpack.c.b16 %v8737, %v8736
  %v10848 = vpack.c.b16 %v8739, %v8738
  %v10849 = vpack.c.b16 %v8741, %v8740
  %v10850 = vpack.c.b16 %v8743, %v8742
  %v10851 = vpack.c.b16 %v8745, %v8744
  %v10852 = vpack.c.b16 %v8747, %v8746
  %v10853 = vpack.c.b16 %v8749, %v8748
  %v10854 = vpack.c.b16 %v8751, %v8750
  %v10855 = vpack.c.b16 %v8753, %v8752
  %v10856 = vpack.c.b16 %v8755, %v8754
  %v10857 = vpack.c.b16 %v8757, %v8756
  %v10858 = vpack.c.b16 %v8759, %v8758
  %v10859 = vpack.c.b16 %v8761, %v8760
  %v10860 = vpack.c.b16 %v8763, %v8762
  %v10861 = vpack.c.b16 %v8765, %v8764
  %v10862 = vpack.c.b16 %v8767, %v8766
  %v10863 = vpack.c.b16 %v8769, %v8768
  %v10864 = vpack.c.b16 %v8771, %v8770
  %v10865 = vpack.c.b16 %v8773, %v8772
  %v10866 = vpack.c.b16 %v8775, %v8774
  %v10867 = vpack.c.b16 %v8777, %v8776
  %v10868 = vpack.c.b16 %v8779, %v8778
  %v10869 = vpack.c.b16 %v8781, %v8780
  %v10870 = vpack.c.b16 %v8783, %v8782
  %v10871 = vpack.c.b16 %v8785, %v8784
  %v10872 = vpack.c.b16 %v8787, %v8786
  %v10873 = vpack.c.b16 %v8789, %v8788
  %v10874 = vpack.c.b16 %v8791, %v8790
  %v10875 = vpack.c.b16 %v8793, %v8792
  %v10876 = vpack.c.b16 %v8795, %v8794
  %v10877 = vpack.c.b16 %v8797, %v8796
  %v10878 = vpack.c.b16 %v8799, %v8798
  %v10879 = vpack.c.b16 %v8801, %v8800
  %v10880 = vpack.c.b16 %v8803, %v8802
  %v10881 = vpack.c.b16 %v8805, %v8804
  %v10882 = vpack.c.b16 %v8807, %v8806
  %v10883 = vpack.c.b16 %v8809, %v8808
  %v10884 = vpack.c.b16 %v8811, %v8810
  %v10885 = vpack.c.b16 %v8813, %v8812
  %v10886 = vpack.c.b16 %v8815, %v8814
  %v10887 = vpack.c.b16 %v8817, %v8816
  %v10888 = vpack.c.b16 %v8819, %v8818
  %v10889 = vpack.c.b16 %v8821, %v8820
  %v10890 = vpack.c.b16 %v8823, %v8822
  %v10891 = vpack.c.b16 %v8825, %v8824
  %v10892 = vpack.c.b16 %v8827, %v8826
  %v10893 = vpack.c.b16 %v8829, %v8828
  %v10894 = vpack.c.b16 %v8831, %v8830
  %v10895 = vpack.c.b16 %v8833, %v8832
  %v10896 = vpack.c.b16 %v8835, %v8834
  %v10897 = vpack.c.b16 %v8837, %v8836
  %v10898 = vpack.c.b16 %v8839, %v8838
  %v10899 = vpack.c.b16 %v8841, %v8840
  %v10900 = vpack.c.b16 %v8843, %v8842
  %v10901 = vpack.c.b16 %v8845, %v8844
  %v10902 = vpack.c.b16 %v8847, %v8846
  %v10903 = vpack.c.b16 %v8849, %v8848
  %v10904 = vpack.c.b16 %v8851, %v8850
  %v10905 = vpack.c.b16 %v8853, %v8852
  %v10906 = vpack.c.b16 %v8855, %v8854
  %v10907 = vpack.c.b16 %v8857, %v8856
  %v10908 = vpack.c.b16 %v8859, %v8858
  %v10909 = vpack.c.b16 %v8861, %v8860
  %v10910 = vpack.c.b16 %v8863, %v8862
  %v10911 = vpack.c.b16 %v8865, %v8864
  %v10912 = vpack.c.b16 %v8867, %v8866
  %v10913 = vpack.c.b16 %v8869, %v8868
  %v10914 = vpack.c.b16 %v8871, %v8870
  %v10915 = vpack.c.b16 %v8873, %v8872
  %v10916 = vpack.c.b16 %v8875, %v8874
  %v10917 = vpack.c.b16 %v8877, %v8876
  %v10918 = vpack.c.b16 %v8879, %v8878
  %v10919 = vpack.c.b16 %v8881, %v8880
  %v10920 = vpack.c.b16 %v8883, %v8882
  %v10921 = vpack.c.b16 %v8885, %v8884
  %v10922 = vpack.c.b16 %v8887, %v8886
  %v10923 = vpack.c.b16 %v8889, %v8888
  %v10924 = vpack.c.b16 %v8891, %v8890
  %v10925 = vpack.c.b16 %v8893, %v8892
  %v10926 = vpack.c.b16 %v8895, %v8894
  %v10927 = vpack.c.b16 %v8897, %v8896
  %v10928 = vpack.c.b16 %v8899, %v8898
  %v10929 = vpack.c.b16 %v8901, %v8900
  %v10930 = vpack.c.b16 %v8903, %v8902
  %v10931 = vpack.c.b16 %v8905, %v8904
  %v10932 = vpack.c.b16 %v8907, %v8906
  %v10933 = vpack.c.b16 %v8909, %v8908
  %v10934 = vpack.c.b16 %v8911, %v8910
  %v10935 = vpack.c.b16 %v8913, %v8912
  %v10936 = vpack.c.b16 %v8915, %v8914
  %v10937 = vpack.c.b16 %v8917, %v8916
  %v10938 = vpack.c.b16 %v8919, %v8918
  %v10939 = vpack.c.b16 %v8921, %v8920
  %v10940 = vpack.c.b16 %v8923, %v8922
  %v10941 = vpack.c.b16 %v8925, %v8924
  %v10942 = vpack.c.b16 %v8927, %v8926
  %v10943 = vpack.c.b16 %v8929, %v8928
  %v10944 = vpack.c.b16 %v8931, %v8930
  %v10945 = vpack.c.b16 %v8933, %v8932
  %v10946 = vpack.c.b16 %v8935, %v8934
  %v10947 = vpack.c.b16 %v8937, %v8936
  %v10948 = vpack.c.b16 %v8939, %v8938
  %v10949 = vpack.c.b16 %v8941, %v8940
  %v10950 = vpack.c.b16 %v8943, %v8942
  %v10951 = vpack.c.b16 %v8945, %v8944
  %v10952 = vpack.c.b16 %v8947, %v8946
  %v10953 = vpack.c.b16 %v8949, %v8948
  %v10954 = vpack.c.b16 %v8951, %v8950
  %v10955 = vpack.c.b16 %v8953, %v8952
  %v10956 = vpack.c.b16 %v8955, %v8954
  %v10957 = vpack.c.b16 %v8957, %v8956
  %v10958 = vpack.c.b16 %v8959, %v8958
  %v10959 = vpack.c.b16 %v8961, %v8960
  %v10960 = vpack.c.b16 %v8963, %v8962
  %v10961 = vpack.c.b16 %v8965, %v8964
  %v10962 = vpack.c.b16 %v8967, %v8966
  %v10963 = vpack.c.b16 %v8969, %v8968
  %v10964 = vpack.c.b16 %v8971, %v8970
  %v10965 = vpack.c.b16 %v8973, %v8972
  %v10966 = vpack.c.b16 %v8975, %v8974
  %v10967 = vpack.c.b16 %v8977, %v8976
  %v10968 = vpack.c.b16 %v8979, %v8978
  %v10969 = vpack.c.b16 %v8981, %v8980
  %v10970 = vpack.c.b16 %v8983, %v8982
  %v10971 = vpack.c.b16 %v8985, %v8984
  %v10972 = vpack.c.b16 %v8987, %v8986
  %v10973 = vpack.c.b16 %v8989, %v8988
  %v10974 = vpack.c.b16 %v8991, %v8990
  %v10975 = vpack.c.b16 %v8993, %v8992
  %v10976 = vpack.c.b16 %v8995, %v8994
  %v10977 = vpack.c.b16 %v8997, %v8996
  %v10978 = vpack.c.b16 %v8999, %v8998
  %v10979 = vpack.c.b16 %v9001, %v9000
  %v10980 = vpack.c.b16 %v9003, %v9002
  %v10981 = vpack.c.b16 %v9005, %v9004
  %v10982 = vpack.c.b16 %v9007, %v9006
  %v10983 = vpack.c.b16 %v9009, %v9008
  %v10984 = vpack.c.b16 %v9011, %v9010
  %v10985 = vpack.c.b16 %v9013, %v9012
  %v10986 = vpack.c.b16 %v9015, %v9014
  %v10987 = vpack.c.b16 %v9017, %v9016
  %v10988 = vpack.c.b16 %v9019, %v9018
  %v10989 = vpack.c.b16 %v9021, %v9020
  %v10990 = vpack.c.b16 %v9023, %v9022
  %v10991 = vpack.c.b16 %v9025, %v9024
  %v10992 = vpack.c.b16 %v9027, %v9026
  %v10993 = vpack.c.b16 %v9029, %v9028
  %v10994 = vpack.c.b16 %v9031, %v9030
  %v10995 = vpack.c.b16 %v9033, %v9032
  %v10996 = vpack.c.b16 %v9035, %v9034
  %v10997 = vpack.c.b16 %v9037, %v9036
  %v10998 = vpack.c.b16 %v9039, %v9038
  %v10999 = vpack.c.b16 %v9041, %v9040
  %v11000 = vpack.c.b16 %v9043, %v9042
  %v11001 = vpack.c.b16 %v9045, %v9044
  %v11002 = vpack.c.b16 %v9047, %v9046
  %v11003 = vpack.c.b16 %v9049, %v9048
  %v11004 = vpack.c.b16 %v9051, %v9050
  %v11005 = vpack.c.b16 %v9053, %v9052
  %v11006 = vpack.c.b16 %v9055, %v9054
  %v11007 = vpack.c.b16 %v9057, %v9056
  %v11008 = vpack.c.b16 %v9059, %v9058
  %v11009 = vpack.c.b16 %v9061, %v9060
  %v11010 = vpack.c.b16 %v9063, %v9062
  %v11011 = vpack.c.b16 %v9065, %v9064
  %v11012 = vpack.c.b16 %v9067, %v9066
  %v11013 = vpack.c.b16 %v9069, %v9068
  %v11014 = vpack.c.b16 %v9071, %v9070
  %v11015 = vpack.c.b16 %v9073, %v9072
  %v11016 = vpack.c.b16 %v9075, %v9074
  %v11017 = vpack.c.b16 %v9077, %v9076
  %v11018 = vpack.c.b16 %v9079, %v9078
  %v11019 = vpack.c.b16 %v9081, %v9080
  %v11020 = vpack.c.b16 %v9083, %v9082
  %v11021 = vpack.c.b16 %v9085, %v9084
  %v11022 = vpack.c.b16 %v9087, %v9086
  %v11023 = vpack.c.b16 %v9089, %v9088
  %v11024 = vpack.c.b16 %v9091, %v9090
  %v11025 = vpack.c.b16 %v9093, %v9092
  %v11026 = vpack.c.b16 %v9095, %v9094
  %v11027 = vpack.c.b16 %v9097, %v9096
  %v11028 = vpack.c.b16 %v9099, %v9098
  %v11029 = vpack.c.b16 %v9101, %v9100
  %v11030 = vpack.c.b16 %v9103, %v9102
  %v11031 = vpack.c.b16 %v9105, %v9104
  %v11032 = vpack.c.b16 %v9107, %v9106
  %v11033 = vpack.c.b16 %v9109, %v9108
  %v11034 = vpack.c.b16 %v9111, %v9110
  %v11035 = vpack.c.b16 %v9113, %v9112
  %v11036 = vpack.c.b16 %v9115, %v9114
  %v11037 = vpack.c.b16 %v9117, %v9116
  %v11038 = vpack.c.b16 %v9119, %v9118
  %v11039 = vpack.c.b16 %v9121, %v9120
  %v11040 = vpack.c.b16 %v9123, %v9122
  %v11041 = vpack.c.b16 %v9125, %v9124
  %v11042 = vpack.c.b16 %v9127, %v9126
  %v11043 = vpack.c.b16 %v9129, %v9128
  %v11044 = vpack.c.b16 %v9131, %v9130
  %v11045 = vpack.c.b16 %v9133, %v9132
  %v11046 = vpack.c.b16 %v9135, %v9134
  %v11047 = vpack.c.b16 %v9137, %v9136
  %v11048 = vpack.c.b16 %v9139, %v9138
  %v11049 = vpack.c.b16 %v9141, %v9140
  %v11050 = vpack.c.b16 %v9143, %v9142
  %v11051 = vpack.c.b16 %v9145, %v9144
  %v11052 = vpack.c.b16 %v9147, %v9146
  %v11053 = vpack.c.b16 %v9149, %v9148
  %v11054 = vpack.c.b16 %v9151, %v9150
  %v11055 = vpack.c.b16 %v9153, %v9152
  %v11056 = vpack.c.b16 %v9155, %v9154
  %v11057 = vpack.c.b16 %v9157, %v9156
  %v11058 = vpack.c.b16 %v9159, %v9158
  %v11059 = vpack.c.b16 %v9161, %v9160
  %v11060 = vpack.c.b16 %v9163, %v9162
  %v11061 = vpack.c.b16 %v9165, %v9164
  %v11062 = vpack.c.b16 %v9167, %v9166
  %v11063 = vpack.c.b16 %v9169, %v9168
  %v11064 = vpack.c.b16 %v9171, %v9170
  %v11065 = vpack.c.b16 %v9173, %v9172
  %v11066 = vpack.c.b16 %v9175, %v9174
  %v11067 = vpack.c.b16 %v9177, %v9176
  %v11068 = vpack.c.b16 %v9179, %v9178
  %v11069 = vpack.c.b16 %v9181, %v9180
  %v11070 = vpack.c.b16 %v9183, %v9182
  %v11071 = vpack.c.b16 %v9185, %v9184
  %v11072 = vpack.c.b16 %v9187, %v9186
  %v11073 = vpack.c.b16 %v9189, %v9188
  %v11074 = vpack.c.b16 %v9191, %v9190
  %v11075 = vpack.c.b16 %v9193, %v9192
  %v11076 = vpack.c.b16 %v9195, %v9194
  %v11077 = vpack.c.b16 %v9197, %v9196
  %v11078 = vpack.c.b16 %v9199, %v9198
  %v11079 = vpack.c.b16 %v9201, %v9200
  %v11080 = vpack.c.b16 %v9203, %v9202
  %v11081 = vpack.c.b16 %v9205, %v9204
  %v11082 = vpack.c.b16 %v9207, %v9206
  %v11083 = vpack.c.b16 %v9209, %v9208
  %v11084 = vpack.c.b16 %v9211, %v9210
  %v11085 = vpack.c.b16 %v9213, %v9212
  %v11086 = vpack.c.b16 %v9215, %v9214
  %v11087 = vpack.c.b16 %v9217, %v9216
  %v11088 = vpack.c.b16 %v9219, %v9218
  %v11089 = vpack.c.b16 %v9221, %v9220
  %v11090 = vpack.c.b16 %v9223, %v9222
  %v11091 = vpack.c.b16 %v9225, %v9224
  %v11092 = vpack.c.b16 %v9227, %v9226
  %v11093 = vpack.c.b16 %v9229, %v9228
  %v11094 = vpack.c.b16 %v9231, %v9230
  %v11095 = vpack.c.b16 %v9233, %v9232
  %v11096 = vpack.c.b16 %v9235, %v9234
  %v11097 = vpack.c.b16 %v9237, %v9236
  %v11098 = vpack.c.b16 %v9239, %v9238
  %v11099 = vpack.c.b16 %v9241, %v9240
  %v11100 = vpack.c.b16 %v9243, %v9242
  %v11101 = vpack.c.b16 %v9245, %v9244
  %v11102 = vpack.c.b16 %v9247, %v9246
  %v11103 = vpack.c.b16 %v9249, %v9248
  %v11104 = vpack.c.b16 %v9251, %v9250
  %v11105 = vpack.c.b16 %v9253, %v9252
  %v11106 = vpack.c.b16 %v9255, %v9254
  %v11107 = vpack.c.b16 %v9257, %v9256
  %v11108 = vpack.c.b16 %v9259, %v9258
  %v11109 = vpack.c.b16 %v9261, %v9260
  %v11110 = vpack.c.b16 %v9263, %v9262
  %v11111 = vpack.c.b16 %v9265, %v9264
  %v11112 = vpack.c.b16 %v9267, %v9266
  %v11113 = vpack.c.b16 %v9269, %v9268
  %v11114 = vpack.c.b16 %v9271, %v9270
  %v11115 = vpack.c.b16 %v9273, %v9272
  %v11116 = vpack.c.b16 %v9275, %v9274
  %v11117 = vpack.c.b16 %v9277, %v9276
  %v11118 = vpack.c.b16 %v9279, %v9278
  %v11119 = vpack.c.b16 %v9281, %v9280
  %v11120 = vpack.c.b16 %v9283, %v9282
  %v11121 = vpack.c.b16 %v9285, %v9284
  %v11122 = vpack.c.b16 %v9287, %v9286
  %v11123 = vpack.c.b16 %v9289, %v9288
  %v11124 = vpack.c.b16 %v9291, %v9290
  %v11125 = vpack.c.b16 %v9293, %v9292
  %v11126 = vpack.c.b16 %v9295, %v9294
  %v11127 = vpack.c.b16 %v9297, %v9296
  %v11128 = vpack.c.b16 %v9299, %v9298
  %v11129 = vpack.c.b16 %v9301, %v9300
  %v11130 = vpack.c.b16 %v9303, %v9302
  %v11131 = vpack.c.b16 %v9305, %v9304
  %v11132 = vpack.c.b16 %v9307, %v9306
  %v11133 = vpack.c.b16 %v9309, %v9308
  %v11134 = vpack.c.b16 %v9311, %v9310
  %v11135 = vpack.c.b16 %v9313, %v9312
  %v11136 = vpack.c.b16 %v9315, %v9314
  %v11137 = vpack.c.b16 %v9317, %v9316
  %v11138 = vpack.c.b16 %v9319, %v9318
  %v11139 = vpack.c.b16 %v9321, %v9320
  %v11140 = vpack.c.b16 %v9323, %v9322
  %v11141 = vpack.c.b16 %v9325, %v9324
  %v11142 = vpack.c.b16 %v9327, %v9326
  %v11143 = vpack.c.b16 %v9329, %v9328
  %v11144 = vpack.c.b16 %v9331, %v9330
  %v11145 = vpack.c.b16 %v9333, %v9332
  %v11146 = vpack.c.b16 %v9335, %v9334
  %v11147 = vpack.c.b16 %v9337, %v9336
  %v11148 = vpack.c.b16 %v9339, %v9338
  %v11149 = vpack.c.b16 %v9341, %v9340
  %v11150 = vpack.c.b16 %v9343, %v9342
  %v11151 = vpack.c.b16 %v9345, %v9344
  %v11152 = vpack.c.b16 %v9347, %v9346
  %v11153 = vpack.c.b16 %v9349, %v9348
  %v11154 = vpack.c.b16 %v9351, %v9350
  %v11155 = vpack.c.b16 %v9353, %v9352
  %v11156 = vpack.c.b16 %v9355, %v9354
  %v11157 = vpack.c.b16 %v9357, %v9356
  %v11158 = vpack.c.b16 %v9359, %v9358
  %v11159 = vpack.c.b16 %v9361, %v9360
  %v11160 = vpack.c.b16 %v9363, %v9362
  %v11161 = vpack.c.b16 %v9365, %v9364
  %v11162 = vpack.c.b16 %v9367, %v9366
  %v11163 = vpack.c.b16 %v9369, %v9368
  %v11164 = vpack.c.b16 %v9371, %v9370
  %v11165 = vpack.c.b16 %v9373, %v9372
  %v11166 = vpack.c.b16 %v9375, %v9374
  %v11167 = vpack.c.b16 %v9377, %v9376
  %v11168 = vpack.c.b16 %v9379, %v9378
  %v11169 = vpack.c.b16 %v9381, %v9380
  %v11170 = vpack.c.b16 %v9383, %v9382
  %v11171 = vpack.c.b16 %v9385, %v9384
  %v11172 = vpack.c.b16 %v9387, %v9386
  %v11173 = vpack.c.b16 %v9389, %v9388
  %v11174 = vpack.c.b16 %v9391, %v9390
  %v11175 = vpack.c.b16 %v9393, %v9392
  %v11176 = vpack.c.b16 %v9395, %v9394
  %v11177 = vpack.c.b16 %v9397, %v9396
  %v11178 = vpack.c.b16 %v9399, %v9398
  %v11179 = vpack.c.b16 %v9401, %v9400
  %v11180 = vpack.c.b16 %v9403, %v9402
  %v11181 = vpack.c.b16 %v9405, %v9404
  %v11182 = vpack.c.b16 %v9407, %v9406
  %v11183 = vpack.c.b16 %v9409, %v9408
  %v11184 = vpack.c.b16 %v9411, %v9410
  %v11185 = vpack.c.b16 %v9413, %v9412
  %v11186 = vpack.c.b16 %v9415, %v9414
  %v11187 = vpack.c.b16 %v9417, %v9416
  %v11188 = vpack.c.b16 %v9419, %v9418
  %v11189 = vpack.c.b16 %v9421, %v9420
  %v11190 = vpack.c.b16 %v9423, %v9422
  %v11191 = vpack.c.b16 %v9425, %v9424
  %v11192 = vpack.c.b16 %v9427, %v9426
  %v11193 = vpack.c.b16 %v9429, %v9428
  %v11194 = vpack.c.b16 %v9431, %v9430
  %v11195 = vpack.c.b16 %v9433, %v9432
  %v11196 = vpack.c.b16 %v9435, %v9434
  %v11197 = vpack.c.b16 %v9437, %v9436
  %v11198 = vpack.c.b16 %v9439, %v9438
  %v11199 = vpack.c.b16 %v9441, %v9440
  %v11200 = vpack.c.b16 %v9443, %v9442
  %v11201 = vpack.c.b16 %v9445, %v9444
  %v11202 = vpack.c.b16 %v9447, %v9446
  %v11203 = vpack.c.b16 %v9449, %v9448
  %v11204 = vpack.c.b16 %v9451, %v9450
  %v11205 = vpack.c.b16 %v9453, %v9452
  %v11206 = vpack.c.b16 %v9455, %v9454
  %v11207 = vpack.c.b16 %v9457, %v9456
  %v11208 = vpack.c.b16 %v9459, %v9458
  %v11209 = vpack.c.b16 %v9461, %v9460
  %v11210 = vpack.c.b16 %v9463, %v9462
  %v11211 = vpack.c.b16 %v9465, %v9464
  %v11212 = vpack.c.b16 %v9467, %v9466
  %v11213 = vpack.c.b16 %v9469, %v9468
  %v11214 = vpack.c.b16 %v9471, %v9470
  %v11215 = vpack.c.b16 %v9473, %v9472
  %v11216 = vpack.c.b16 %v9475, %v9474
  %v11217 = vpack.c.b16 %v9477, %v9476
  %v11218 = vpack.c.b16 %v9479, %v9478
  %v11219 = vpack.c.b16 %v9481, %v9480
  %v11220 = vpack.c.b16 %v9483, %v9482
  %v11221 = vpack.c.b16 %v9485, %v9484
  %v11222 = vpack.c.b16 %v9487, %v9486
  %v11223 = vpack.c.b16 %v9489, %v9488
  %v11224 = vpack.c.b16 %v9491, %v9490
  %v11225 = vpack.c.b16 %v9493, %v9492
  %v11226 = vpack.c.b16 %v9495, %v9494
  %v11227 = vpack.c.b16 %v9497, %v9496
  %v11228 = vpack.c.b16 %v9499, %v9498
  %v11229 = vpack.c.b16 %v9501, %v9500
  %v11230 = vpack.c.b16 %v9503, %v9502
  %v11231 = vpack.c.b16 %v9505, %v9504
  %v11232 = vpack.c.b16 %v9507, %v9506
  %v11233 = vpack.c.b16 %v9509, %v9508
  %v11234 = vpack.c.b16 %v9511, %v9510
  %v11235 = vpack.c.b16 %v9513, %v9512
  %v11236 = vpack.c.b16 %v9515, %v9514
  %v11237 = vpack.c.b16 %v9517, %v9516
  %v11238 = vpack.c.b16 %v9519, %v9518
  %v11239 = vpack.c.b16 %v9521, %v9520
  %v11240 = vpack.c.b16 %v9523, %v9522
  %v11241 = vpack.c.b16 %v9525, %v9524
  %v11242 = vpack.c.b16 %v9527, %v9526
  %v11243 = vpack.c.b16 %v9529, %v9528
  %v11244 = vpack.c.b16 %v9531, %v9530
  %v11245 = vpack.c.b16 %v9533, %v9532
  %v11246 = vpack.c.b16 %v9535, %v9534
  %v11247 = vpack.c.b16 %v9537, %v9536
  %v11248 = vpack.c.b16 %v9539, %v9538
  %v11249 = vpack.c.b16 %v9541, %v9540
  %v11250 = vpack.c.b16 %v9543, %v9542
  %v11251 = vpack.c.b16 %v9545, %v9544
  %v11252 = vpack.c.b16 %v9547, %v9546
  %v11253 = vpack.c.b16 %v9549, %v9548
  %v11254 = vpack.c.b16 %v9551, %v9550
  %v11255 = vpack.c.b16 %v9553, %v9552
  %v11256 = vpack.c.b16 %v9555, %v9554
  %v11257 = vpack.c.b16 %v9557, %v9556
  %v11258 = vpack.c.b16 %v9559, %v9558
  %v11259 = vpack.c.b16 %v9561, %v9560
  %v11260 = vpack.c.b16 %v9563, %v9562
  %v11261 = vpack.c.b16 %v9565, %v9564
  %v11262 = vpack.c.b16 %v9567, %v9566
  %v11263 = vpack.c.b16 %v9569, %v9568
  %v11264 = vpack.c.b16 %v9571, %v9570
  %v11265 = vpack.c.b16 %v9573, %v9572
  %v11266 = vpack.c.b16 %v9575, %v9574
  %v11267 = vpack.c.b16 %v9577, %v9576
  %v11268 = vpack.c.b16 %v9579, %v9578
  %v11269 = vpack.c.b16 %v9581, %v9580
  %v11270 = vpack.c.b16 %v9583, %v9582
  %v11271 = vpack.c.b16 %v9585, %v9584
  %v11272 = vpack.c.b16 %v9587, %v9586
  %v11273 = vpack.c.b16 %v9589, %v9588
  %v11274 = vpack.c.b16 %v9591, %v9590
  %v11275 = vpack.c.b16 %v9593, %v9592
  %v11276 = vpack.c.b16 %v9595, %v9594
  %v11277 = vpack.c.b16 %v9597, %v9596
  %v11278 = vpack.c.b16 %v9599, %v9598
  %v11279 = vpack.c.b16 %v9601, %v9600
  %v11280 = vpack.c.b16 %v9603, %v9602
  %v11281 = vpack.c.b16 %v9605, %v9604
  %v11282 = vpack.c.b16 %v9607, %v9606
  %v11283 = vpack.c.b16 %v9609, %v9608
  %v11284 = vpack.c.b16 %v9611, %v9610
  %v11285 = vpack.c.b16 %v9613, %v9612
  %v11286 = vpack.c.b16 %v9615, %v9614
  %v11287 = vpack.c.b16 %v9617, %v9616
  %v11288 = vpack.c.b16 %v9619, %v9618
  %v11289 = vpack.c.b16 %v9621, %v9620
  %v11290 = vpack.c.b16 %v9623, %v9622
  %v11291 = vpack.c.b16 %v9625, %v9624
  %v11292 = vpack.c.b16 %v9627, %v9626
  %v11293 = vpack.c.b16 %v9629, %v9628
  %v11294 = vpack.c.b16 %v9631, %v9630
  %v11295 = vpack.c.b16 %v9633, %v9632
  %v11296 = vpack.c.b16 %v9635, %v9634
  %v11297 = vpack.c.b16 %v9637, %v9636
  %v11298 = vpack.c.b16 %v9639, %v9638
  %v11299 = vpack.c.b16 %v9641, %v9640
  %v11300 = vpack.c.b16 %v9643, %v9642
  %v11301 = vpack.c.b16 %v9645, %v9644
  %v11302 = vpack.c.b16 %v9647, %v9646
  %v11303 = vpack.c.b16 %v9649, %v9648
  %v11304 = vpack.c.b16 %v9651, %v9650
  %v11305 = vpack.c.b16 %v9653, %v9652
  %v11306 = vpack.c.b16 %v9655, %v9654
  %v11307 = vpack.c.b16 %v9657, %v9656
  %v11308 = vpack.c.b16 %v9659, %v9658
  %v11309 = vpack.c.b16 %v9661, %v9660
  %v11310 = vpack.c.b16 %v9663, %v9662
  %v11311 = vpack.c.b16 %v9665, %v9664
  %v11312 = vpack.c.b16 %v9667, %v9666
  %v11313 = vpack.c.b16 %v9669, %v9668
  %v11314 = vpack.c.b16 %v9671, %v9670
  %v11315 = vpack.c.b16 %v9673, %v9672
  %v11316 = vpack.c.b16 %v9675, %v9674
  %v11317 = vpack.c.b16 %v9677, %v9676
  %v11318 = vpack.c.b16 %v9679, %v9678
  %v11319 = vpack.c.b16 %v9681, %v9680
  %v11320 = vpack.c.b16 %v9683, %v9682
  %v11321 = vpack.c.b16 %v9685, %v9684
  %v11322 = vpack.c.b16 %v9687, %v9686
  %v11323 = vpack.c.b16 %v9689, %v9688
  %v11324 = vpack.c.b16 %v9691, %v9690
  %v11325 = vpack.c.b16 %v9693, %v9692
  %v11326 = vpack.c.b16 %v9695, %v9694
  %v11327 = vpack.c.b16 %v9697, %v9696
  %v11328 = vpack.c.b16 %v9699, %v9698
  %v11329 = vpack.c.b16 %v9701, %v9700
  %v11330 = vpack.c.b16 %v9703, %v9702
  %v11331 = vpack.c.b16 %v9705, %v9704
  %v11332 = vpack.c.b16 %v9707, %v9706
  %v11333 = vpack.c.b16 %v9709, %v9708
  %v11334 = vpack.c.b16 %v9711, %v9710
  %v11335 = vpack.c.b16 %v9713, %v9712
  %v11336 = vpack.c.b16 %v9715, %v9714
  %v11337 = vpack.c.b16 %v9717, %v9716
  %v11338 = vpack.c.b16 %v9719, %v9718
  %v11339 = vpack.c.b16 %v9721, %v9720
  %v11340 = vpack.c.b16 %v9723, %v9722
  %v11341 = vpack.c.b16 %v9725, %v9724
  %v11342 = vpack.c.b16 %v9727, %v9726
  %v11343 = vpack.c.b16 %v9729, %v9728
  %v11344 = vpack.c.b16 %v9731, %v9730
  %v11345 = vpack.c.b16 %v9733, %v9732
  %v11346 = vpack.c.b16 %v9735, %v9734
  %v11347 = vpack.c.b16 %v9737, %v9736
  %v11348 = vpack.c.b16 %v9739, %v9738
  %v11349 = vpack.c.b16 %v9741, %v9740
  %v11350 = vpack.c.b16 %v9743, %v9742
  %v11351 = vpack.c.b16 %v9745, %v9744
  %v11352 = vpack.c.b16 %v9747, %v9746
  %v11353 = vpack.c.b16 %v9749, %v9748
  %v11354 = vpack.c.b16 %v9751, %v9750
  %v11355 = vpack.c.b16 %v9753, %v9752
  %v11356 = vpack.c.b16 %v9755, %v9754
  %v11357 = vpack.c.b16 %v9757, %v9756
  %v11358 = vpack.c.b16 %v9759, %v9758
  %v11359 = vpack.c.b16 %v9761, %v9760
  %v11360 = vpack.c.b16 %v9763, %v9762
  %v11361 = vpack.c.b16 %v9765, %v9764
  %v11362 = vpack.c.b16 %v9767, %v9766
  %v11363 = vpack.c.b16 %v9769, %v9768
  %v11364 = vpack.c.b16 %v9771, %v9770
  %v11365 = vpack.c.b16 %v9773, %v9772
  %v11366 = vpack.c.b16 %v9775, %v9774
  %v11367 = vpack.c.b16 %v9777, %v9776
  %v11368 = vpack.c.b16 %v9779, %v9778
  %v11369 = vpack.c.b16 %v9781, %v9780
  %v11370 = vpack.c.b16 %v9783, %v9782
  %v11371 = vpack.c.b16 %v9785, %v9784
  %v11372 = vpack.c.b16 %v9787, %v9786
  %v11373 = vpack.c.b16 %v9789, %v9788
  %v11374 = vpack.c.b16 %v9791, %v9790
  %v11375 = vpack.c.b16 %v9793, %v9792
  %v11376 = vpack.c.b16 %v9795, %v9794
  %v11377 = vpack.c.b16 %v9797, %v9796
  %v11378 = vpack.c.b16 %v9799, %v9798
  %v11379 = vpack.c.b16 %v9801, %v9800
  %v11380 = vpack.c.b16 %v9803, %v9802
  %v11381 = vpack.c.b16 %v9805, %v9804
  %v11382 = vpack.c.b16 %v9807, %v9806
  %v11383 = vpack.c.b16 %v9809, %v9808
  %v11384 = vpack.c.b16 %v9811, %v9810
  %v11385 = vpack.c.b16 %v9813, %v9812
  %v11386 = vpack.c.b16 %v9815, %v9814
  %v11387 = vpack.c.b16 %v9817, %v9816
  %v11388 = vpack.c.b16 %v9819, %v9818
  %v11389 = vpack.c.b16 %v9821, %v9820
  %12958 = vmatprep.subr.bf16.mxu0 0
  %12959 = vmatpush1.bf16.msra.mxu0 %v9829
  %12960 = vmatprep.subr.bf16.mxu0 0
  %12961 = vmatpush1.bf16.msra.mxu0 %v9828
  %12962 = vmatprep.subr.bf16.mxu0 0
  %12963 = vmatpush1.bf16.msra.mxu0 %v9827
  %12964 = vmatprep.subr.bf16.mxu0 0
  %12965 = vmatpush1.bf16.msra.mxu0 %v9826
  %12966 = vmatprep.subr.bf16.mxu0 0
  %12967 = vmatpush1.bf16.msra.mxu0 %v9825
  %12968 = vmatprep.subr.bf16.mxu0 0
  %12969 = vmatpush1.bf16.msra.mxu0 %v9824
  %12970 = vmatprep.subr.bf16.mxu0 0
  %12971 = vmatpush1.bf16.msra.mxu0 %v9823
  %12972 = vmatprep.subr.bf16.mxu0 0
  %12973 = vmatpush1.bf16.msra.mxu0 %v9822
  %12974 = vmatprep.subr.bf16.mxu0 0
  %12975 = vmatpush2.bf16.msra.mxu0 %v9837
  %12976 = vmatprep.subr.bf16.mxu0 0
  %12977 = vmatpush2.bf16.msra.mxu0 %v9836
  %12978 = vmatprep.subr.bf16.mxu0 0
  %12979 = vmatpush2.bf16.msra.mxu0 %v9835
  %12980 = vmatprep.subr.bf16.mxu0 0
  %12981 = vmatpush2.bf16.msra.mxu0 %v9834
  %12982 = vmatprep.subr.bf16.mxu0 0
  %12983 = vmatpush2.bf16.msra.mxu0 %v9833
  %12984 = vmatprep.subr.bf16.mxu0 0
  %12985 = vmatpush2.bf16.msra.mxu0 %v9832
  %12986 = vmatprep.subr.bf16.mxu0 0
  %12987 = vmatpush2.bf16.msra.mxu0 %v9831
  %12988 = vmatprep.subr.bf16.mxu0 0
  %12989 = vmatpush2.bf16.msra.mxu0 %v9830
  %12990 = vmatprep.mubr.bf16.mxu0 %v212
  %12991 = vmatmul.mubr.bf16.gmra.mxu0 %v211
  %v12992 = vpop.f32.mrf.mxu0
  %v12993 = vadd.f32 %v3548, %v12992
  %v12994 = vpop.f32.mrf.mxu0
  %v12995 = vpop.f32.mrf.mxu0
  %v12996 = vpop.f32.mrf.mxu0
  %12997 = vdwg.mxu0
  %12998 = vmatprep.subr.bf16.mxu0 0
  %12999 = vmatpush1.bf16.msra.mxu0 %v9845
  %13000 = vmatprep.subr.bf16.mxu0 0
  %13001 = vmatpush1.bf16.msra.mxu0 %v9844
  %13002 = vmatprep.subr.bf16.mxu0 0
  %13003 = vmatpush1.bf16.msra.mxu0 %v9843
  %13004 = vmatprep.subr.bf16.mxu0 0
  %13005 = vmatpush1.bf16.msra.mxu0 %v9842
  %13006 = vmatprep.subr.bf16.mxu0 0
  %13007 = vmatpush1.bf16.msra.mxu0 %v9841
  %13008 = vmatprep.subr.bf16.mxu0 0
  %13009 = vmatpush1.bf16.msra.mxu0 %v9840
  %13010 = vmatprep.subr.bf16.mxu0 0
  %13011 = vmatpush1.bf16.msra.mxu0 %v9839
  %13012 = vmatprep.subr.bf16.mxu0 0
  %13013 = vmatpush1.bf16.msra.mxu0 %v9838
  %13014 = vmatprep.subr.bf16.mxu0 0
  %13015 = vmatpush2.bf16.msra.mxu0 %v9853
  %13016 = vmatprep.subr.bf16.mxu0 0
  %13017 = vmatpush2.bf16.msra.mxu0 %v9852
  %13018 = vmatprep.subr.bf16.mxu0 0
  %13019 = vmatpush2.bf16.msra.mxu0 %v9851
  %13020 = vmatprep.subr.bf16.mxu0 0
  %13021 = vmatpush2.bf16.msra.mxu0 %v9850
  %13022 = vmatprep.subr.bf16.mxu0 0
  %13023 = vmatpush2.bf16.msra.mxu0 %v9849
  %13024 = vmatprep.subr.bf16.mxu0 0
  %13025 = vmatpush2.bf16.msra.mxu0 %v9848
  %13026 = vmatprep.subr.bf16.mxu0 0
  %13027 = vmatpush2.bf16.msra.mxu0 %v9847
  %13028 = vmatprep.subr.bf16.mxu0 0
  %13029 = vmatpush2.bf16.msra.mxu0 %v9846
  %13030 = vmatprep.mubr.bf16.mxu0 %v214
  %13031 = vmatmul.mubr.bf16.gmra.mxu0 %v213
  %v13032 = vpop.f32.mrf.mxu0
  %v13033 = vadd.f32 %v12993, %v13032
  %v13034 = vpop.f32.mrf.mxu0
  %v13035 = vpop.f32.mrf.mxu0
  %v13036 = vpop.f32.mrf.mxu0
  %13037 = vdwg.mxu0
  %13038 = vmatprep.subr.bf16.mxu0 0
  %13039 = vmatpush1.bf16.msra.mxu0 %v9861
  %13040 = vmatprep.subr.bf16.mxu0 0
  %13041 = vmatpush1.bf16.msra.mxu0 %v9860
  %13042 = vmatprep.subr.bf16.mxu0 0
  %13043 = vmatpush1.bf16.msra.mxu0 %v9859
  %13044 = vmatprep.subr.bf16.mxu0 0
  %13045 = vmatpush1.bf16.msra.mxu0 %v9858
  %13046 = vmatprep.subr.bf16.mxu0 0
  %13047 = vmatpush1.bf16.msra.mxu0 %v9857
  %13048 = vmatprep.subr.bf16.mxu0 0
  %13049 = vmatpush1.bf16.msra.mxu0 %v9856
  %13050 = vmatprep.subr.bf16.mxu0 0
  %13051 = vmatpush1.bf16.msra.mxu0 %v9855
  %13052 = vmatprep.subr.bf16.mxu0 0
  %13053 = vmatpush1.bf16.msra.mxu0 %v9854
  %13054 = vmatprep.subr.bf16.mxu0 0
  %13055 = vmatpush2.bf16.msra.mxu0 %v9869
  %13056 = vmatprep.subr.bf16.mxu0 0
  %13057 = vmatpush2.bf16.msra.mxu0 %v9868
  %13058 = vmatprep.subr.bf16.mxu0 0
  %13059 = vmatpush2.bf16.msra.mxu0 %v9867
  %13060 = vmatprep.subr.bf16.mxu0 0
  %13061 = vmatpush2.bf16.msra.mxu0 %v9866
  %13062 = vmatprep.subr.bf16.mxu0 0
  %13063 = vmatpush2.bf16.msra.mxu0 %v9865
  %13064 = vmatprep.subr.bf16.mxu0 0
  %13065 = vmatpush2.bf16.msra.mxu0 %v9864
  %13066 = vmatprep.subr.bf16.mxu0 0
  %13067 = vmatpush2.bf16.msra.mxu0 %v9863
  %13068 = vmatprep.subr.bf16.mxu0 0
  %13069 = vmatpush2.bf16.msra.mxu0 %v9862
  %13070 = vmatprep.mubr.bf16.mxu0 %v216
  %13071 = vmatmul.mubr.bf16.gmra.mxu0 %v215
  %v13072 = vpop.f32.mrf.mxu0
  %v13073 = vadd.f32 %v13033, %v13072
  %v13074 = vpop.f32.mrf.mxu0
  %v13075 = vpop.f32.mrf.mxu0
  %v13076 = vpop.f32.mrf.mxu0
  %13077 = vdwg.mxu0
  %13078 = vmatprep.subr.bf16.mxu0 0
  %13079 = vmatpush1.bf16.msra.mxu0 %v9877
  %13080 = vmatprep.subr.bf16.mxu0 0
  %13081 = vmatpush1.bf16.msra.mxu0 %v9876
  %13082 = vmatprep.subr.bf16.mxu0 0
  %13083 = vmatpush1.bf16.msra.mxu0 %v9875
  %13084 = vmatprep.subr.bf16.mxu0 0
  %13085 = vmatpush1.bf16.msra.mxu0 %v9874
  %13086 = vmatprep.subr.bf16.mxu0 0
  %13087 = vmatpush1.bf16.msra.mxu0 %v9873
  %13088 = vmatprep.subr.bf16.mxu0 0
  %13089 = vmatpush1.bf16.msra.mxu0 %v9872
  %13090 = vmatprep.subr.bf16.mxu0 0
  %13091 = vmatpush1.bf16.msra.mxu0 %v9871
  %13092 = vmatprep.subr.bf16.mxu0 0
  %13093 = vmatpush1.bf16.msra.mxu0 %v9870
  %13094 = vmatprep.subr.bf16.mxu0 0
  %13095 = vmatpush2.bf16.msra.mxu0 %v9885
  %13096 = vmatprep.subr.bf16.mxu0 0
  %13097 = vmatpush2.bf16.msra.mxu0 %v9884
  %13098 = vmatprep.subr.bf16.mxu0 0
  %13099 = vmatpush2.bf16.msra.mxu0 %v9883
  %13100 = vmatprep.subr.bf16.mxu0 0
  %13101 = vmatpush2.bf16.msra.mxu0 %v9882
  %13102 = vmatprep.subr.bf16.mxu0 0
  %13103 = vmatpush2.bf16.msra.mxu0 %v9881
  %13104 = vmatprep.subr.bf16.mxu0 0
  %13105 = vmatpush2.bf16.msra.mxu0 %v9880
  %13106 = vmatprep.subr.bf16.mxu0 0
  %13107 = vmatpush2.bf16.msra.mxu0 %v9879
  %13108 = vmatprep.subr.bf16.mxu0 0
  %13109 = vmatpush2.bf16.msra.mxu0 %v9878
  %13110 = vmatprep.mubr.bf16.mxu0 %v218
  %13111 = vmatmul.mubr.bf16.gmra.mxu0 %v217
  %v13112 = vpop.f32.mrf.mxu0
  %v13113 = vadd.f32 %v13073, %v13112
  %v13114 = vpop.f32.mrf.mxu0
  %v13115 = vpop.f32.mrf.mxu0
  %v13116 = vpop.f32.mrf.mxu0
  %13117 = vdwg.mxu0
  %13118 = vmatprep.subr.bf16.mxu0 0
  %13119 = vmatpush1.bf16.msra.mxu0 %v9893
  %13120 = vmatprep.subr.bf16.mxu0 0
  %13121 = vmatpush1.bf16.msra.mxu0 %v9892
  %13122 = vmatprep.subr.bf16.mxu0 0
  %13123 = vmatpush1.bf16.msra.mxu0 %v9891
  %13124 = vmatprep.subr.bf16.mxu0 0
  %13125 = vmatpush1.bf16.msra.mxu0 %v9890
  %13126 = vmatprep.subr.bf16.mxu0 0
  %13127 = vmatpush1.bf16.msra.mxu0 %v9889
  %13128 = vmatprep.subr.bf16.mxu0 0
  %13129 = vmatpush1.bf16.msra.mxu0 %v9888
  %13130 = vmatprep.subr.bf16.mxu0 0
  %13131 = vmatpush1.bf16.msra.mxu0 %v9887
  %13132 = vmatprep.subr.bf16.mxu0 0
  %13133 = vmatpush1.bf16.msra.mxu0 %v9886
  %13134 = vmatprep.subr.bf16.mxu0 0
  %13135 = vmatpush2.bf16.msra.mxu0 %v9901
  %13136 = vmatprep.subr.bf16.mxu0 0
  %13137 = vmatpush2.bf16.msra.mxu0 %v9900
  %13138 = vmatprep.subr.bf16.mxu0 0
  %13139 = vmatpush2.bf16.msra.mxu0 %v9899
  %13140 = vmatprep.subr.bf16.mxu0 0
  %13141 = vmatpush2.bf16.msra.mxu0 %v9898
  %13142 = vmatprep.subr.bf16.mxu0 0
  %13143 = vmatpush2.bf16.msra.mxu0 %v9897
  %13144 = vmatprep.subr.bf16.mxu0 0
  %13145 = vmatpush2.bf16.msra.mxu0 %v9896
  %13146 = vmatprep.subr.bf16.mxu0 0
  %13147 = vmatpush2.bf16.msra.mxu0 %v9895
  %13148 = vmatprep.subr.bf16.mxu0 0
  %13149 = vmatpush2.bf16.msra.mxu0 %v9894
  %13150 = vmatprep.mubr.bf16.mxu0 %v220
  %13151 = vmatmul.mubr.bf16.gmra.mxu0 %v219
  %v13152 = vpop.f32.mrf.mxu0
  %v13153 = vadd.f32 %v13113, %v13152
  %v13154 = vpop.f32.mrf.mxu0
  %v13155 = vpop.f32.mrf.mxu0
  %v13156 = vpop.f32.mrf.mxu0
  %13157 = vdwg.mxu0
  %13158 = vmatprep.subr.bf16.mxu0 0
  %13159 = vmatpush1.bf16.msra.mxu0 %v9909
  %13160 = vmatprep.subr.bf16.mxu0 0
  %13161 = vmatpush1.bf16.msra.mxu0 %v9908
  %13162 = vmatprep.subr.bf16.mxu0 0
  %13163 = vmatpush1.bf16.msra.mxu0 %v9907
  %13164 = vmatprep.subr.bf16.mxu0 0
  %13165 = vmatpush1.bf16.msra.mxu0 %v9906
  %13166 = vmatprep.subr.bf16.mxu0 0
  %13167 = vmatpush1.bf16.msra.mxu0 %v9905
  %13168 = vmatprep.subr.bf16.mxu0 0
  %13169 = vmatpush1.bf16.msra.mxu0 %v9904
  %13170 = vmatprep.subr.bf16.mxu0 0
  %13171 = vmatpush1.bf16.msra.mxu0 %v9903
  %13172 = vmatprep.subr.bf16.mxu0 0
  %13173 = vmatpush1.bf16.msra.mxu0 %v9902
  %13174 = vmatprep.subr.bf16.mxu0 0
  %13175 = vmatpush2.bf16.msra.mxu0 %v9917
  %13176 = vmatprep.subr.bf16.mxu0 0
  %13177 = vmatpush2.bf16.msra.mxu0 %v9916
  %13178 = vmatprep.subr.bf16.mxu0 0
  %13179 = vmatpush2.bf16.msra.mxu0 %v9915
  %13180 = vmatprep.subr.bf16.mxu0 0
  %13181 = vmatpush2.bf16.msra.mxu0 %v9914
  %13182 = vmatprep.subr.bf16.mxu0 0
  %13183 = vmatpush2.bf16.msra.mxu0 %v9913
  %13184 = vmatprep.subr.bf16.mxu0 0
  %13185 = vmatpush2.bf16.msra.mxu0 %v9912
  %13186 = vmatprep.subr.bf16.mxu0 0
  %13187 = vmatpush2.bf16.msra.mxu0 %v9911
  %13188 = vmatprep.subr.bf16.mxu0 0
  %13189 = vmatpush2.bf16.msra.mxu0 %v9910
  %13190 = vmatprep.mubr.bf16.mxu0 %v222
  %13191 = vmatmul.mubr.bf16.gmra.mxu0 %v221
  %v13192 = vpop.f32.mrf.mxu0
  %v13193 = vadd.f32 %v13153, %v13192
  %v13194 = vpop.f32.mrf.mxu0
  %v13195 = vpop.f32.mrf.mxu0
  %v13196 = vpop.f32.mrf.mxu0
  %13197 = vdwg.mxu0
  %13198 = vmatprep.subr.bf16.mxu0 0
  %13199 = vmatpush1.bf16.msra.mxu0 %v9925
  %13200 = vmatprep.subr.bf16.mxu0 0
  %13201 = vmatpush1.bf16.msra.mxu0 %v9924
  %13202 = vmatprep.subr.bf16.mxu0 0
  %13203 = vmatpush1.bf16.msra.mxu0 %v9923
  %13204 = vmatprep.subr.bf16.mxu0 0
  %13205 = vmatpush1.bf16.msra.mxu0 %v9922
  %13206 = vmatprep.subr.bf16.mxu0 0
  %13207 = vmatpush1.bf16.msra.mxu0 %v9921
  %13208 = vmatprep.subr.bf16.mxu0 0
  %13209 = vmatpush1.bf16.msra.mxu0 %v9920
  %13210 = vmatprep.subr.bf16.mxu0 0
  %13211 = vmatpush1.bf16.msra.mxu0 %v9919
  %13212 = vmatprep.subr.bf16.mxu0 0
  %13213 = vmatpush1.bf16.msra.mxu0 %v9918
  %13214 = vmatprep.subr.bf16.mxu0 0
  %13215 = vmatpush2.bf16.msra.mxu0 %v9933
  %13216 = vmatprep.subr.bf16.mxu0 0
  %13217 = vmatpush2.bf16.msra.mxu0 %v9932
  %13218 = vmatprep.subr.bf16.mxu0 0
  %13219 = vmatpush2.bf16.msra.mxu0 %v9931
  %13220 = vmatprep.subr.bf16.mxu0 0
  %13221 = vmatpush2.bf16.msra.mxu0 %v9930
  %13222 = vmatprep.subr.bf16.mxu0 0
  %13223 = vmatpush2.bf16.msra.mxu0 %v9929
  %13224 = vmatprep.subr.bf16.mxu0 0
  %13225 = vmatpush2.bf16.msra.mxu0 %v9928
  %13226 = vmatprep.subr.bf16.mxu0 0
  %13227 = vmatpush2.bf16.msra.mxu0 %v9927
  %13228 = vmatprep.subr.bf16.mxu0 0
  %13229 = vmatpush2.bf16.msra.mxu0 %v9926
  %13230 = vmatprep.mubr.bf16.mxu0 %v224
  %13231 = vmatmul.mubr.bf16.gmra.mxu0 %v223
  %v13232 = vpop.f32.mrf.mxu0
  %v13233 = vadd.f32 %v13193, %v13232
  %v13234 = vpop.f32.mrf.mxu0
  %v13235 = vpop.f32.mrf.mxu0
  %v13236 = vpop.f32.mrf.mxu0
  %13237 = vdwg.mxu0
  %13238 = vmatprep.subr.bf16.mxu0 0
  %13239 = vmatpush1.bf16.msra.mxu0 %v9941
  %13240 = vmatprep.subr.bf16.mxu0 0
  %13241 = vmatpush1.bf16.msra.mxu0 %v9940
  %13242 = vmatprep.subr.bf16.mxu0 0
  %13243 = vmatpush1.bf16.msra.mxu0 %v9939
  %13244 = vmatprep.subr.bf16.mxu0 0
  %13245 = vmatpush1.bf16.msra.mxu0 %v9938
  %13246 = vmatprep.subr.bf16.mxu0 0
  %13247 = vmatpush1.bf16.msra.mxu0 %v9937
  %13248 = vmatprep.subr.bf16.mxu0 0
  %13249 = vmatpush1.bf16.msra.mxu0 %v9936
  %13250 = vmatprep.subr.bf16.mxu0 0
  %13251 = vmatpush1.bf16.msra.mxu0 %v9935
  %13252 = vmatprep.subr.bf16.mxu0 0
  %13253 = vmatpush1.bf16.msra.mxu0 %v9934
  %13254 = vmatprep.subr.bf16.mxu0 0
  %13255 = vmatpush2.bf16.msra.mxu0 %v9949
  %13256 = vmatprep.subr.bf16.mxu0 0
  %13257 = vmatpush2.bf16.msra.mxu0 %v9948
  %13258 = vmatprep.subr.bf16.mxu0 0
  %13259 = vmatpush2.bf16.msra.mxu0 %v9947
  %13260 = vmatprep.subr.bf16.mxu0 0
  %13261 = vmatpush2.bf16.msra.mxu0 %v9946
  %13262 = vmatprep.subr.bf16.mxu0 0
  %13263 = vmatpush2.bf16.msra.mxu0 %v9945
  %13264 = vmatprep.subr.bf16.mxu0 0
  %13265 = vmatpush2.bf16.msra.mxu0 %v9944
  %13266 = vmatprep.subr.bf16.mxu0 0
  %13267 = vmatpush2.bf16.msra.mxu0 %v9943
  %13268 = vmatprep.subr.bf16.mxu0 0
  %13269 = vmatpush2.bf16.msra.mxu0 %v9942
  %13270 = vmatprep.mubr.bf16.mxu0 %v226
  %13271 = vmatmul.mubr.bf16.gmra.mxu0 %v225
  %v13272 = vpop.f32.mrf.mxu0
  %v13273 = vadd.f32 %v13233, %v13272
  %v13274 = vpop.f32.mrf.mxu0
  %v13275 = vpop.f32.mrf.mxu0
  %v13276 = vpop.f32.mrf.mxu0
  %13277 = vdwg.mxu0
  %13278 = vmatprep.subr.bf16.mxu0 0
  %13279 = vmatpush1.bf16.msra.mxu0 %v9957
  %13280 = vmatprep.subr.bf16.mxu0 0
  %13281 = vmatpush1.bf16.msra.mxu0 %v9956
  %13282 = vmatprep.subr.bf16.mxu0 0
  %13283 = vmatpush1.bf16.msra.mxu0 %v9955
  %13284 = vmatprep.subr.bf16.mxu0 0
  %13285 = vmatpush1.bf16.msra.mxu0 %v9954
  %13286 = vmatprep.subr.bf16.mxu0 0
  %13287 = vmatpush1.bf16.msra.mxu0 %v9953
  %13288 = vmatprep.subr.bf16.mxu0 0
  %13289 = vmatpush1.bf16.msra.mxu0 %v9952
  %13290 = vmatprep.subr.bf16.mxu0 0
  %13291 = vmatpush1.bf16.msra.mxu0 %v9951
  %13292 = vmatprep.subr.bf16.mxu0 0
  %13293 = vmatpush1.bf16.msra.mxu0 %v9950
  %13294 = vmatprep.subr.bf16.mxu0 0
  %13295 = vmatpush2.bf16.msra.mxu0 %v9965
  %13296 = vmatprep.subr.bf16.mxu0 0
  %13297 = vmatpush2.bf16.msra.mxu0 %v9964
  %13298 = vmatprep.subr.bf16.mxu0 0
  %13299 = vmatpush2.bf16.msra.mxu0 %v9963
  %13300 = vmatprep.subr.bf16.mxu0 0
  %13301 = vmatpush2.bf16.msra.mxu0 %v9962
  %13302 = vmatprep.subr.bf16.mxu0 0
  %13303 = vmatpush2.bf16.msra.mxu0 %v9961
  %13304 = vmatprep.subr.bf16.mxu0 0
  %13305 = vmatpush2.bf16.msra.mxu0 %v9960
  %13306 = vmatprep.subr.bf16.mxu0 0
  %13307 = vmatpush2.bf16.msra.mxu0 %v9959
  %13308 = vmatprep.subr.bf16.mxu0 0
  %13309 = vmatpush2.bf16.msra.mxu0 %v9958
  %13310 = vmatprep.mubr.bf16.mxu0 %v228
  %13311 = vmatmul.mubr.bf16.gmra.mxu0 %v227
  %v13312 = vpop.f32.mrf.mxu0
  %v13313 = vadd.f32 %v13273, %v13312
  %v13314 = vpop.f32.mrf.mxu0
  %v13315 = vpop.f32.mrf.mxu0
  %v13316 = vpop.f32.mrf.mxu0
  %13317 = vdwg.mxu0
  %13318 = vmatprep.subr.bf16.mxu0 0
  %13319 = vmatpush1.bf16.msra.mxu0 %v9973
  %13320 = vmatprep.subr.bf16.mxu0 0
  %13321 = vmatpush1.bf16.msra.mxu0 %v9972
  %13322 = vmatprep.subr.bf16.mxu0 0
  %13323 = vmatpush1.bf16.msra.mxu0 %v9971
  %13324 = vmatprep.subr.bf16.mxu0 0
  %13325 = vmatpush1.bf16.msra.mxu0 %v9970
  %13326 = vmatprep.subr.bf16.mxu0 0
  %13327 = vmatpush1.bf16.msra.mxu0 %v9969
  %13328 = vmatprep.subr.bf16.mxu0 0
  %13329 = vmatpush1.bf16.msra.mxu0 %v9968
  %13330 = vmatprep.subr.bf16.mxu0 0
  %13331 = vmatpush1.bf16.msra.mxu0 %v9967
  %13332 = vmatprep.subr.bf16.mxu0 0
  %13333 = vmatpush1.bf16.msra.mxu0 %v9966
  %13334 = vmatprep.subr.bf16.mxu0 0
  %13335 = vmatpush2.bf16.msra.mxu0 %v9981
  %13336 = vmatprep.subr.bf16.mxu0 0
  %13337 = vmatpush2.bf16.msra.mxu0 %v9980
  %13338 = vmatprep.subr.bf16.mxu0 0
  %13339 = vmatpush2.bf16.msra.mxu0 %v9979
  %13340 = vmatprep.subr.bf16.mxu0 0
  %13341 = vmatpush2.bf16.msra.mxu0 %v9978
  %13342 = vmatprep.subr.bf16.mxu0 0
  %13343 = vmatpush2.bf16.msra.mxu0 %v9977
  %13344 = vmatprep.subr.bf16.mxu0 0
  %13345 = vmatpush2.bf16.msra.mxu0 %v9976
  %13346 = vmatprep.subr.bf16.mxu0 0
  %13347 = vmatpush2.bf16.msra.mxu0 %v9975
  %13348 = vmatprep.subr.bf16.mxu0 0
  %13349 = vmatpush2.bf16.msra.mxu0 %v9974
  %13350 = vmatprep.mubr.bf16.mxu0 %v230
  %13351 = vmatmul.mubr.bf16.gmra.mxu0 %v229
  %v13352 = vpop.f32.mrf.mxu0
  %v13353 = vadd.f32 %v13313, %v13352
  %v13354 = vpop.f32.mrf.mxu0
  %v13355 = vpop.f32.mrf.mxu0
  %v13356 = vpop.f32.mrf.mxu0
  %13357 = vdwg.mxu0
  %13358 = vmatprep.subr.bf16.mxu0 0
  %13359 = vmatpush1.bf16.msra.mxu0 %v9989
  %13360 = vmatprep.subr.bf16.mxu0 0
  %13361 = vmatpush1.bf16.msra.mxu0 %v9988
  %13362 = vmatprep.subr.bf16.mxu0 0
  %13363 = vmatpush1.bf16.msra.mxu0 %v9987
  %13364 = vmatprep.subr.bf16.mxu0 0
  %13365 = vmatpush1.bf16.msra.mxu0 %v9986
  %13366 = vmatprep.subr.bf16.mxu0 0
  %13367 = vmatpush1.bf16.msra.mxu0 %v9985
  %13368 = vmatprep.subr.bf16.mxu0 0
  %13369 = vmatpush1.bf16.msra.mxu0 %v9984
  %13370 = vmatprep.subr.bf16.mxu0 0
  %13371 = vmatpush1.bf16.msra.mxu0 %v9983
  %13372 = vmatprep.subr.bf16.mxu0 0
  %13373 = vmatpush1.bf16.msra.mxu0 %v9982
  %13374 = vmatprep.subr.bf16.mxu0 0
  %13375 = vmatpush2.bf16.msra.mxu0 %v9997
  %13376 = vmatprep.subr.bf16.mxu0 0
  %13377 = vmatpush2.bf16.msra.mxu0 %v9996
  %13378 = vmatprep.subr.bf16.mxu0 0
  %13379 = vmatpush2.bf16.msra.mxu0 %v9995
  %13380 = vmatprep.subr.bf16.mxu0 0
  %13381 = vmatpush2.bf16.msra.mxu0 %v9994
  %13382 = vmatprep.subr.bf16.mxu0 0
  %13383 = vmatpush2.bf16.msra.mxu0 %v9993
  %13384 = vmatprep.subr.bf16.mxu0 0
  %13385 = vmatpush2.bf16.msra.mxu0 %v9992
  %13386 = vmatprep.subr.bf16.mxu0 0
  %13387 = vmatpush2.bf16.msra.mxu0 %v9991
  %13388 = vmatprep.subr.bf16.mxu0 0
  %13389 = vmatpush2.bf16.msra.mxu0 %v9990
  %13390 = vmatprep.mubr.bf16.mxu0 %v232
  %13391 = vmatmul.mubr.bf16.gmra.mxu0 %v231
  %v13392 = vpop.f32.mrf.mxu0
  %v13393 = vadd.f32 %v13353, %v13392
  %v13394 = vpop.f32.mrf.mxu0
  %v13395 = vpop.f32.mrf.mxu0
  %v13396 = vpop.f32.mrf.mxu0
  %13397 = vdwg.mxu0
  %13398 = vmatprep.subr.bf16.mxu0 0
  %13399 = vmatpush1.bf16.msra.mxu0 %v10005
  %13400 = vmatprep.subr.bf16.mxu0 0
  %13401 = vmatpush1.bf16.msra.mxu0 %v10004
  %13402 = vmatprep.subr.bf16.mxu0 0
  %13403 = vmatpush1.bf16.msra.mxu0 %v10003
  %13404 = vmatprep.subr.bf16.mxu0 0
  %13405 = vmatpush1.bf16.msra.mxu0 %v10002
  %13406 = vmatprep.subr.bf16.mxu0 0
  %13407 = vmatpush1.bf16.msra.mxu0 %v10001
  %13408 = vmatprep.subr.bf16.mxu0 0
  %13409 = vmatpush1.bf16.msra.mxu0 %v10000
  %13410 = vmatprep.subr.bf16.mxu0 0
  %13411 = vmatpush1.bf16.msra.mxu0 %v9999
  %13412 = vmatprep.subr.bf16.mxu0 0
  %13413 = vmatpush1.bf16.msra.mxu0 %v9998
  %13414 = vmatprep.subr.bf16.mxu0 0
  %13415 = vmatpush2.bf16.msra.mxu0 %v10013
  %13416 = vmatprep.subr.bf16.mxu0 0
  %13417 = vmatpush2.bf16.msra.mxu0 %v10012
  %13418 = vmatprep.subr.bf16.mxu0 0
  %13419 = vmatpush2.bf16.msra.mxu0 %v10011
  %13420 = vmatprep.subr.bf16.mxu0 0
  %13421 = vmatpush2.bf16.msra.mxu0 %v10010
  %13422 = vmatprep.subr.bf16.mxu0 0
  %13423 = vmatpush2.bf16.msra.mxu0 %v10009
  %13424 = vmatprep.subr.bf16.mxu0 0
  %13425 = vmatpush2.bf16.msra.mxu0 %v10008
  %13426 = vmatprep.subr.bf16.mxu0 0
  %13427 = vmatpush2.bf16.msra.mxu0 %v10007
  %13428 = vmatprep.subr.bf16.mxu0 0
  %13429 = vmatpush2.bf16.msra.mxu0 %v10006
  %13430 = vmatprep.mubr.bf16.mxu0 %v234
  %13431 = vmatmul.mubr.bf16.gmra.mxu0 %v233
  %v13432 = vpop.f32.mrf.mxu0
  %v13433 = vadd.f32 %v13393, %v13432
  %v13434 = vpop.f32.mrf.mxu0
  %v13435 = vpop.f32.mrf.mxu0
  %v13436 = vpop.f32.mrf.mxu0
  %13437 = vdwg.mxu0
  %13438 = vmatprep.subr.bf16.mxu0 0
  %13439 = vmatpush1.bf16.msra.mxu0 %v10021
  %13440 = vmatprep.subr.bf16.mxu0 0
  %13441 = vmatpush1.bf16.msra.mxu0 %v10020
  %13442 = vmatprep.subr.bf16.mxu0 0
  %13443 = vmatpush1.bf16.msra.mxu0 %v10019
  %13444 = vmatprep.subr.bf16.mxu0 0
  %13445 = vmatpush1.bf16.msra.mxu0 %v10018
  %13446 = vmatprep.subr.bf16.mxu0 0
  %13447 = vmatpush1.bf16.msra.mxu0 %v10017
  %13448 = vmatprep.subr.bf16.mxu0 0
  %13449 = vmatpush1.bf16.msra.mxu0 %v10016
  %13450 = vmatprep.subr.bf16.mxu0 0
  %13451 = vmatpush1.bf16.msra.mxu0 %v10015
  %13452 = vmatprep.subr.bf16.mxu0 0
  %13453 = vmatpush1.bf16.msra.mxu0 %v10014
  %13454 = vmatprep.subr.bf16.mxu0 0
  %13455 = vmatpush2.bf16.msra.mxu0 %v10029
  %13456 = vmatprep.subr.bf16.mxu0 0
  %13457 = vmatpush2.bf16.msra.mxu0 %v10028
  %13458 = vmatprep.subr.bf16.mxu0 0
  %13459 = vmatpush2.bf16.msra.mxu0 %v10027
  %13460 = vmatprep.subr.bf16.mxu0 0
  %13461 = vmatpush2.bf16.msra.mxu0 %v10026
  %13462 = vmatprep.subr.bf16.mxu0 0
  %13463 = vmatpush2.bf16.msra.mxu0 %v10025
  %13464 = vmatprep.subr.bf16.mxu0 0
  %13465 = vmatpush2.bf16.msra.mxu0 %v10024
  %13466 = vmatprep.subr.bf16.mxu0 0
  %13467 = vmatpush2.bf16.msra.mxu0 %v10023
  %13468 = vmatprep.subr.bf16.mxu0 0
  %13469 = vmatpush2.bf16.msra.mxu0 %v10022
  %13470 = vmatprep.mubr.bf16.mxu0 %v236
  %13471 = vmatmul.mubr.bf16.gmra.mxu0 %v235
  %v13472 = vpop.f32.mrf.mxu0
  %v13473 = vadd.f32 %v13433, %v13472
  %v13474 = vpop.f32.mrf.mxu0
  %v13475 = vpop.f32.mrf.mxu0
  %v13476 = vpop.f32.mrf.mxu0
  %13477 = vdwg.mxu0
  %13478 = vmatprep.subr.bf16.mxu0 0
  %13479 = vmatpush1.bf16.msra.mxu0 %v10037
  %13480 = vmatprep.subr.bf16.mxu0 0
  %13481 = vmatpush1.bf16.msra.mxu0 %v10036
  %13482 = vmatprep.subr.bf16.mxu0 0
  %13483 = vmatpush1.bf16.msra.mxu0 %v10035
  %13484 = vmatprep.subr.bf16.mxu0 0
  %13485 = vmatpush1.bf16.msra.mxu0 %v10034
  %13486 = vmatprep.subr.bf16.mxu0 0
  %13487 = vmatpush1.bf16.msra.mxu0 %v10033
  %13488 = vmatprep.subr.bf16.mxu0 0
  %13489 = vmatpush1.bf16.msra.mxu0 %v10032
  %13490 = vmatprep.subr.bf16.mxu0 0
  %13491 = vmatpush1.bf16.msra.mxu0 %v10031
  %13492 = vmatprep.subr.bf16.mxu0 0
  %13493 = vmatpush1.bf16.msra.mxu0 %v10030
  %13494 = vmatprep.subr.bf16.mxu0 0
  %13495 = vmatpush2.bf16.msra.mxu0 %v10045
  %13496 = vmatprep.subr.bf16.mxu0 0
  %13497 = vmatpush2.bf16.msra.mxu0 %v10044
  %13498 = vmatprep.subr.bf16.mxu0 0
  %13499 = vmatpush2.bf16.msra.mxu0 %v10043
  %13500 = vmatprep.subr.bf16.mxu0 0
  %13501 = vmatpush2.bf16.msra.mxu0 %v10042
  %13502 = vmatprep.subr.bf16.mxu0 0
  %13503 = vmatpush2.bf16.msra.mxu0 %v10041
  %13504 = vmatprep.subr.bf16.mxu0 0
  %13505 = vmatpush2.bf16.msra.mxu0 %v10040
  %13506 = vmatprep.subr.bf16.mxu0 0
  %13507 = vmatpush2.bf16.msra.mxu0 %v10039
  %13508 = vmatprep.subr.bf16.mxu0 0
  %13509 = vmatpush2.bf16.msra.mxu0 %v10038
  %13510 = vmatprep.mubr.bf16.mxu0 %v238
  %13511 = vmatmul.mubr.bf16.gmra.mxu0 %v237
  %v13512 = vpop.f32.mrf.mxu0
  %v13513 = vadd.f32 %v13473, %v13512
  %v13514 = vpop.f32.mrf.mxu0
  %v13515 = vpop.f32.mrf.mxu0
  %v13516 = vpop.f32.mrf.mxu0
  %13517 = vdwg.mxu0
  %13518 = vmatprep.subr.bf16.mxu0 0
  %13519 = vmatpush1.bf16.msra.mxu0 %v10053
  %13520 = vmatprep.subr.bf16.mxu0 0
  %13521 = vmatpush1.bf16.msra.mxu0 %v10052
  %13522 = vmatprep.subr.bf16.mxu0 0
  %13523 = vmatpush1.bf16.msra.mxu0 %v10051
  %13524 = vmatprep.subr.bf16.mxu0 0
  %13525 = vmatpush1.bf16.msra.mxu0 %v10050
  %13526 = vmatprep.subr.bf16.mxu0 0
  %13527 = vmatpush1.bf16.msra.mxu0 %v10049
  %13528 = vmatprep.subr.bf16.mxu0 0
  %13529 = vmatpush1.bf16.msra.mxu0 %v10048
  %13530 = vmatprep.subr.bf16.mxu0 0
  %13531 = vmatpush1.bf16.msra.mxu0 %v10047
  %13532 = vmatprep.subr.bf16.mxu0 0
  %13533 = vmatpush1.bf16.msra.mxu0 %v10046
  %13534 = vmatprep.subr.bf16.mxu0 0
  %13535 = vmatpush2.bf16.msra.mxu0 %v10061
  %13536 = vmatprep.subr.bf16.mxu0 0
  %13537 = vmatpush2.bf16.msra.mxu0 %v10060
  %13538 = vmatprep.subr.bf16.mxu0 0
  %13539 = vmatpush2.bf16.msra.mxu0 %v10059
  %13540 = vmatprep.subr.bf16.mxu0 0
  %13541 = vmatpush2.bf16.msra.mxu0 %v10058
  %13542 = vmatprep.subr.bf16.mxu0 0
  %13543 = vmatpush2.bf16.msra.mxu0 %v10057
  %13544 = vmatprep.subr.bf16.mxu0 0
  %13545 = vmatpush2.bf16.msra.mxu0 %v10056
  %13546 = vmatprep.subr.bf16.mxu0 0
  %13547 = vmatpush2.bf16.msra.mxu0 %v10055
  %13548 = vmatprep.subr.bf16.mxu0 0
  %13549 = vmatpush2.bf16.msra.mxu0 %v10054
  %13550 = vmatprep.mubr.bf16.mxu0 %v240
  %13551 = vmatmul.mubr.bf16.gmra.mxu0 %v239
  %v13552 = vpop.f32.mrf.mxu0
  %v13553 = vadd.f32 %v13513, %v13552
  %v13554 = vpop.f32.mrf.mxu0
  %v13555 = vpop.f32.mrf.mxu0
  %v13556 = vpop.f32.mrf.mxu0
  %13557 = vdwg.mxu0
  %13558 = vmatprep.subr.bf16.mxu0 0
  %13559 = vmatpush1.bf16.msra.mxu0 %v10069
  %13560 = vmatprep.subr.bf16.mxu0 0
  %13561 = vmatpush1.bf16.msra.mxu0 %v10068
  %13562 = vmatprep.subr.bf16.mxu0 0
  %13563 = vmatpush1.bf16.msra.mxu0 %v10067
  %13564 = vmatprep.subr.bf16.mxu0 0
  %13565 = vmatpush1.bf16.msra.mxu0 %v10066
  %13566 = vmatprep.subr.bf16.mxu0 0
  %13567 = vmatpush1.bf16.msra.mxu0 %v10065
  %13568 = vmatprep.subr.bf16.mxu0 0
  %13569 = vmatpush1.bf16.msra.mxu0 %v10064
  %13570 = vmatprep.subr.bf16.mxu0 0
  %13571 = vmatpush1.bf16.msra.mxu0 %v10063
  %13572 = vmatprep.subr.bf16.mxu0 0
  %13573 = vmatpush1.bf16.msra.mxu0 %v10062
  %13574 = vmatprep.subr.bf16.mxu0 0
  %13575 = vmatpush2.bf16.msra.mxu0 %v10077
  %13576 = vmatprep.subr.bf16.mxu0 0
  %13577 = vmatpush2.bf16.msra.mxu0 %v10076
  %13578 = vmatprep.subr.bf16.mxu0 0
  %13579 = vmatpush2.bf16.msra.mxu0 %v10075
  %13580 = vmatprep.subr.bf16.mxu0 0
  %13581 = vmatpush2.bf16.msra.mxu0 %v10074
  %13582 = vmatprep.subr.bf16.mxu0 0
  %13583 = vmatpush2.bf16.msra.mxu0 %v10073
  %13584 = vmatprep.subr.bf16.mxu0 0
  %13585 = vmatpush2.bf16.msra.mxu0 %v10072
  %13586 = vmatprep.subr.bf16.mxu0 0
  %13587 = vmatpush2.bf16.msra.mxu0 %v10071
  %13588 = vmatprep.subr.bf16.mxu0 0
  %13589 = vmatpush2.bf16.msra.mxu0 %v10070
  %13590 = vmatprep.mubr.bf16.mxu0 %v242
  %13591 = vmatmul.mubr.bf16.gmra.mxu0 %v241
  %v13592 = vpop.f32.mrf.mxu0
  %v13593 = vadd.f32 %v13553, %v13592
  %v13594 = vpop.f32.mrf.mxu0
  %v13595 = vpop.f32.mrf.mxu0
  %v13596 = vpop.f32.mrf.mxu0
  %13597 = vdwg.mxu0
  %13598 = vmatprep.subr.bf16.mxu0 0
  %13599 = vmatpush1.bf16.msra.mxu0 %v10085
  %13600 = vmatprep.subr.bf16.mxu0 0
  %13601 = vmatpush1.bf16.msra.mxu0 %v10084
  %13602 = vmatprep.subr.bf16.mxu0 0
  %13603 = vmatpush1.bf16.msra.mxu0 %v10083
  %13604 = vmatprep.subr.bf16.mxu0 0
  %13605 = vmatpush1.bf16.msra.mxu0 %v10082
  %13606 = vmatprep.subr.bf16.mxu0 0
  %13607 = vmatpush1.bf16.msra.mxu0 %v10081
  %13608 = vmatprep.subr.bf16.mxu0 0
  %13609 = vmatpush1.bf16.msra.mxu0 %v10080
  %13610 = vmatprep.subr.bf16.mxu0 0
  %13611 = vmatpush1.bf16.msra.mxu0 %v10079
  %13612 = vmatprep.subr.bf16.mxu0 0
  %13613 = vmatpush1.bf16.msra.mxu0 %v10078
  %13614 = vmatprep.subr.bf16.mxu0 0
  %13615 = vmatpush2.bf16.msra.mxu0 %v10093
  %13616 = vmatprep.subr.bf16.mxu0 0
  %13617 = vmatpush2.bf16.msra.mxu0 %v10092
  %13618 = vmatprep.subr.bf16.mxu0 0
  %13619 = vmatpush2.bf16.msra.mxu0 %v10091
  %13620 = vmatprep.subr.bf16.mxu0 0
  %13621 = vmatpush2.bf16.msra.mxu0 %v10090
  %13622 = vmatprep.subr.bf16.mxu0 0
  %13623 = vmatpush2.bf16.msra.mxu0 %v10089
  %13624 = vmatprep.subr.bf16.mxu0 0
  %13625 = vmatpush2.bf16.msra.mxu0 %v10088
  %13626 = vmatprep.subr.bf16.mxu0 0
  %13627 = vmatpush2.bf16.msra.mxu0 %v10087
  %13628 = vmatprep.subr.bf16.mxu0 0
  %13629 = vmatpush2.bf16.msra.mxu0 %v10086
  %13630 = vmatprep.mubr.bf16.mxu0 %v244
  %13631 = vmatmul.mubr.bf16.gmra.mxu0 %v243
  %v13632 = vpop.f32.mrf.mxu0
  %v13633 = vadd.f32 %v13593, %v13632
  %v13634 = vpop.f32.mrf.mxu0
  %v13635 = vpop.f32.mrf.mxu0
  %v13636 = vpop.f32.mrf.mxu0
  %13637 = vdwg.mxu0
  %13638 = vmatprep.subr.bf16.mxu0 0
  %13639 = vmatpush1.bf16.msra.mxu0 %v10101
  %13640 = vmatprep.subr.bf16.mxu0 0
  %13641 = vmatpush1.bf16.msra.mxu0 %v10100
  %13642 = vmatprep.subr.bf16.mxu0 0
  %13643 = vmatpush1.bf16.msra.mxu0 %v10099
  %13644 = vmatprep.subr.bf16.mxu0 0
  %13645 = vmatpush1.bf16.msra.mxu0 %v10098
  %13646 = vmatprep.subr.bf16.mxu0 0
  %13647 = vmatpush1.bf16.msra.mxu0 %v10097
  %13648 = vmatprep.subr.bf16.mxu0 0
  %13649 = vmatpush1.bf16.msra.mxu0 %v10096
  %13650 = vmatprep.subr.bf16.mxu0 0
  %13651 = vmatpush1.bf16.msra.mxu0 %v10095
  %13652 = vmatprep.subr.bf16.mxu0 0
  %13653 = vmatpush1.bf16.msra.mxu0 %v10094
  %13654 = vmatprep.subr.bf16.mxu0 0
  %13655 = vmatpush2.bf16.msra.mxu0 %v10109
  %13656 = vmatprep.subr.bf16.mxu0 0
  %13657 = vmatpush2.bf16.msra.mxu0 %v10108
  %13658 = vmatprep.subr.bf16.mxu0 0
  %13659 = vmatpush2.bf16.msra.mxu0 %v10107
  %13660 = vmatprep.subr.bf16.mxu0 0
  %13661 = vmatpush2.bf16.msra.mxu0 %v10106
  %13662 = vmatprep.subr.bf16.mxu0 0
  %13663 = vmatpush2.bf16.msra.mxu0 %v10105
  %13664 = vmatprep.subr.bf16.mxu0 0
  %13665 = vmatpush2.bf16.msra.mxu0 %v10104
  %13666 = vmatprep.subr.bf16.mxu0 0
  %13667 = vmatpush2.bf16.msra.mxu0 %v10103
  %13668 = vmatprep.subr.bf16.mxu0 0
  %13669 = vmatpush2.bf16.msra.mxu0 %v10102
  %13670 = vmatprep.mubr.bf16.mxu0 %v246
  %13671 = vmatmul.mubr.bf16.gmra.mxu0 %v245
  %v13672 = vpop.f32.mrf.mxu0
  %v13673 = vadd.f32 %v13633, %v13672
  %v13674 = vpop.f32.mrf.mxu0
  %v13675 = vpop.f32.mrf.mxu0
  %v13676 = vpop.f32.mrf.mxu0
  %13677 = vdwg.mxu0
  %13678 = vmatprep.subr.bf16.mxu0 0
  %13679 = vmatpush1.bf16.msra.mxu0 %v10117
  %13680 = vmatprep.subr.bf16.mxu0 0
  %13681 = vmatpush1.bf16.msra.mxu0 %v10116
  %13682 = vmatprep.subr.bf16.mxu0 0
  %13683 = vmatpush1.bf16.msra.mxu0 %v10115
  %13684 = vmatprep.subr.bf16.mxu0 0
  %13685 = vmatpush1.bf16.msra.mxu0 %v10114
  %13686 = vmatprep.subr.bf16.mxu0 0
  %13687 = vmatpush1.bf16.msra.mxu0 %v10113
  %13688 = vmatprep.subr.bf16.mxu0 0
  %13689 = vmatpush1.bf16.msra.mxu0 %v10112
  %13690 = vmatprep.subr.bf16.mxu0 0
  %13691 = vmatpush1.bf16.msra.mxu0 %v10111
  %13692 = vmatprep.subr.bf16.mxu0 0
  %13693 = vmatpush1.bf16.msra.mxu0 %v10110
  %13694 = vmatprep.subr.bf16.mxu0 0
  %13695 = vmatpush2.bf16.msra.mxu0 %v10125
  %13696 = vmatprep.subr.bf16.mxu0 0
  %13697 = vmatpush2.bf16.msra.mxu0 %v10124
  %13698 = vmatprep.subr.bf16.mxu0 0
  %13699 = vmatpush2.bf16.msra.mxu0 %v10123
  %13700 = vmatprep.subr.bf16.mxu0 0
  %13701 = vmatpush2.bf16.msra.mxu0 %v10122
  %13702 = vmatprep.subr.bf16.mxu0 0
  %13703 = vmatpush2.bf16.msra.mxu0 %v10121
  %13704 = vmatprep.subr.bf16.mxu0 0
  %13705 = vmatpush2.bf16.msra.mxu0 %v10120
  %13706 = vmatprep.subr.bf16.mxu0 0
  %13707 = vmatpush2.bf16.msra.mxu0 %v10119
  %13708 = vmatprep.subr.bf16.mxu0 0
  %13709 = vmatpush2.bf16.msra.mxu0 %v10118
  %13710 = vmatprep.mubr.bf16.mxu0 %v248
  %13711 = vmatmul.mubr.bf16.gmra.mxu0 %v247
  %v13712 = vpop.f32.mrf.mxu0
  %v13713 = vadd.f32 %v13673, %v13712
  %v13714 = vpop.f32.mrf.mxu0
  %v13715 = vpop.f32.mrf.mxu0
  %v13716 = vpop.f32.mrf.mxu0
  %13717 = vdwg.mxu0
  %13718 = vmatprep.subr.bf16.mxu0 0
  %13719 = vmatpush1.bf16.msra.mxu0 %v10133
  %13720 = vmatprep.subr.bf16.mxu0 0
  %13721 = vmatpush1.bf16.msra.mxu0 %v10132
  %13722 = vmatprep.subr.bf16.mxu0 0
  %13723 = vmatpush1.bf16.msra.mxu0 %v10131
  %13724 = vmatprep.subr.bf16.mxu0 0
  %13725 = vmatpush1.bf16.msra.mxu0 %v10130
  %13726 = vmatprep.subr.bf16.mxu0 0
  %13727 = vmatpush1.bf16.msra.mxu0 %v10129
  %13728 = vmatprep.subr.bf16.mxu0 0
  %13729 = vmatpush1.bf16.msra.mxu0 %v10128
  %13730 = vmatprep.subr.bf16.mxu0 0
  %13731 = vmatpush1.bf16.msra.mxu0 %v10127
  %13732 = vmatprep.subr.bf16.mxu0 0
  %13733 = vmatpush1.bf16.msra.mxu0 %v10126
  %13734 = vmatprep.subr.bf16.mxu0 0
  %13735 = vmatpush2.bf16.msra.mxu0 %v10141
  %13736 = vmatprep.subr.bf16.mxu0 0
  %13737 = vmatpush2.bf16.msra.mxu0 %v10140
  %13738 = vmatprep.subr.bf16.mxu0 0
  %13739 = vmatpush2.bf16.msra.mxu0 %v10139
  %13740 = vmatprep.subr.bf16.mxu0 0
  %13741 = vmatpush2.bf16.msra.mxu0 %v10138
  %13742 = vmatprep.subr.bf16.mxu0 0
  %13743 = vmatpush2.bf16.msra.mxu0 %v10137
  %13744 = vmatprep.subr.bf16.mxu0 0
  %13745 = vmatpush2.bf16.msra.mxu0 %v10136
  %13746 = vmatprep.subr.bf16.mxu0 0
  %13747 = vmatpush2.bf16.msra.mxu0 %v10135
  %13748 = vmatprep.subr.bf16.mxu0 0
  %13749 = vmatpush2.bf16.msra.mxu0 %v10134
  %13750 = vmatprep.mubr.bf16.mxu0 %v250
  %13751 = vmatmul.mubr.bf16.gmra.mxu0 %v249
  %v13752 = vpop.f32.mrf.mxu0
  %v13753 = vadd.f32 %v13713, %v13752
  %v13754 = vpop.f32.mrf.mxu0
  %v13755 = vpop.f32.mrf.mxu0
  %v13756 = vpop.f32.mrf.mxu0
  %13757 = vdwg.mxu0
  %13758 = vmatprep.subr.bf16.mxu0 0
  %13759 = vmatpush1.bf16.msra.mxu0 %v10149
  %13760 = vmatprep.subr.bf16.mxu0 0
  %13761 = vmatpush1.bf16.msra.mxu0 %v10148
  %13762 = vmatprep.subr.bf16.mxu0 0
  %13763 = vmatpush1.bf16.msra.mxu0 %v10147
  %13764 = vmatprep.subr.bf16.mxu0 0
  %13765 = vmatpush1.bf16.msra.mxu0 %v10146
  %13766 = vmatprep.subr.bf16.mxu0 0
  %13767 = vmatpush1.bf16.msra.mxu0 %v10145
  %13768 = vmatprep.subr.bf16.mxu0 0
  %13769 = vmatpush1.bf16.msra.mxu0 %v10144
  %13770 = vmatprep.subr.bf16.mxu0 0
  %13771 = vmatpush1.bf16.msra.mxu0 %v10143
  %13772 = vmatprep.subr.bf16.mxu0 0
  %13773 = vmatpush1.bf16.msra.mxu0 %v10142
  %13774 = vmatprep.subr.bf16.mxu0 0
  %13775 = vmatpush2.bf16.msra.mxu0 %v10157
  %13776 = vmatprep.subr.bf16.mxu0 0
  %13777 = vmatpush2.bf16.msra.mxu0 %v10156
  %13778 = vmatprep.subr.bf16.mxu0 0
  %13779 = vmatpush2.bf16.msra.mxu0 %v10155
  %13780 = vmatprep.subr.bf16.mxu0 0
  %13781 = vmatpush2.bf16.msra.mxu0 %v10154
  %13782 = vmatprep.subr.bf16.mxu0 0
  %13783 = vmatpush2.bf16.msra.mxu0 %v10153
  %13784 = vmatprep.subr.bf16.mxu0 0
  %13785 = vmatpush2.bf16.msra.mxu0 %v10152
  %13786 = vmatprep.subr.bf16.mxu0 0
  %13787 = vmatpush2.bf16.msra.mxu0 %v10151
  %13788 = vmatprep.subr.bf16.mxu0 0
  %13789 = vmatpush2.bf16.msra.mxu0 %v10150
  %13790 = vmatprep.mubr.bf16.mxu0 %v252
  %13791 = vmatmul.mubr.bf16.gmra.mxu0 %v251
  %v13792 = vpop.f32.mrf.mxu0
  %v13793 = vadd.f32 %v13753, %v13792
  %v13794 = vpop.f32.mrf.mxu0
  %v13795 = vpop.f32.mrf.mxu0
  %v13796 = vpop.f32.mrf.mxu0
  %13797 = vdwg.mxu0
  %13798 = vmatprep.subr.bf16.mxu0 0
  %13799 = vmatpush1.bf16.msra.mxu0 %v10165
  %13800 = vmatprep.subr.bf16.mxu0 0
  %13801 = vmatpush1.bf16.msra.mxu0 %v10164
  %13802 = vmatprep.subr.bf16.mxu0 0
  %13803 = vmatpush1.bf16.msra.mxu0 %v10163
  %13804 = vmatprep.subr.bf16.mxu0 0
  %13805 = vmatpush1.bf16.msra.mxu0 %v10162
  %13806 = vmatprep.subr.bf16.mxu0 0
  %13807 = vmatpush1.bf16.msra.mxu0 %v10161
  %13808 = vmatprep.subr.bf16.mxu0 0
  %13809 = vmatpush1.bf16.msra.mxu0 %v10160
  %13810 = vmatprep.subr.bf16.mxu0 0
  %13811 = vmatpush1.bf16.msra.mxu0 %v10159
  %13812 = vmatprep.subr.bf16.mxu0 0
  %13813 = vmatpush1.bf16.msra.mxu0 %v10158
  %13814 = vmatprep.subr.bf16.mxu0 0
  %13815 = vmatpush2.bf16.msra.mxu0 %v10173
  %13816 = vmatprep.subr.bf16.mxu0 0
  %13817 = vmatpush2.bf16.msra.mxu0 %v10172
  %13818 = vmatprep.subr.bf16.mxu0 0
  %13819 = vmatpush2.bf16.msra.mxu0 %v10171
  %13820 = vmatprep.subr.bf16.mxu0 0
  %13821 = vmatpush2.bf16.msra.mxu0 %v10170
  %13822 = vmatprep.subr.bf16.mxu0 0
  %13823 = vmatpush2.bf16.msra.mxu0 %v10169
  %13824 = vmatprep.subr.bf16.mxu0 0
  %13825 = vmatpush2.bf16.msra.mxu0 %v10168
  %13826 = vmatprep.subr.bf16.mxu0 0
  %13827 = vmatpush2.bf16.msra.mxu0 %v10167
  %13828 = vmatprep.subr.bf16.mxu0 0
  %13829 = vmatpush2.bf16.msra.mxu0 %v10166
  %13830 = vmatprep.mubr.bf16.mxu0 %v254
  %13831 = vmatmul.mubr.bf16.gmra.mxu0 %v253
  %v13832 = vpop.f32.mrf.mxu0
  %v13833 = vadd.f32 %v13793, %v13832
  %v13834 = vpop.f32.mrf.mxu0
  %v13835 = vpop.f32.mrf.mxu0
  %v13836 = vpop.f32.mrf.mxu0
  %13837 = vdwg.mxu0
  %13838 = vmatprep.subr.bf16.mxu0 0
  %13839 = vmatpush1.bf16.msra.mxu0 %v10181
  %13840 = vmatprep.subr.bf16.mxu0 0
  %13841 = vmatpush1.bf16.msra.mxu0 %v10180
  %13842 = vmatprep.subr.bf16.mxu0 0
  %13843 = vmatpush1.bf16.msra.mxu0 %v10179
  %13844 = vmatprep.subr.bf16.mxu0 0
  %13845 = vmatpush1.bf16.msra.mxu0 %v10178
  %13846 = vmatprep.subr.bf16.mxu0 0
  %13847 = vmatpush1.bf16.msra.mxu0 %v10177
  %13848 = vmatprep.subr.bf16.mxu0 0
  %13849 = vmatpush1.bf16.msra.mxu0 %v10176
  %13850 = vmatprep.subr.bf16.mxu0 0
  %13851 = vmatpush1.bf16.msra.mxu0 %v10175
  %13852 = vmatprep.subr.bf16.mxu0 0
  %13853 = vmatpush1.bf16.msra.mxu0 %v10174
  %13854 = vmatprep.subr.bf16.mxu0 0
  %13855 = vmatpush2.bf16.msra.mxu0 %v10189
  %13856 = vmatprep.subr.bf16.mxu0 0
  %13857 = vmatpush2.bf16.msra.mxu0 %v10188
  %13858 = vmatprep.subr.bf16.mxu0 0
  %13859 = vmatpush2.bf16.msra.mxu0 %v10187
  %13860 = vmatprep.subr.bf16.mxu0 0
  %13861 = vmatpush2.bf16.msra.mxu0 %v10186
  %13862 = vmatprep.subr.bf16.mxu0 0
  %13863 = vmatpush2.bf16.msra.mxu0 %v10185
  %13864 = vmatprep.subr.bf16.mxu0 0
  %13865 = vmatpush2.bf16.msra.mxu0 %v10184
  %13866 = vmatprep.subr.bf16.mxu0 0
  %13867 = vmatpush2.bf16.msra.mxu0 %v10183
  %13868 = vmatprep.subr.bf16.mxu0 0
  %13869 = vmatpush2.bf16.msra.mxu0 %v10182
  %13870 = vmatprep.mubr.bf16.mxu0 %v256
  %13871 = vmatmul.mubr.bf16.gmra.mxu0 %v255
  %v13872 = vpop.f32.mrf.mxu0
  %v13873 = vadd.f32 %v13833, %v13872
  %v13874 = vpop.f32.mrf.mxu0
  %v13875 = vpop.f32.mrf.mxu0
  %v13876 = vpop.f32.mrf.mxu0
  %13877 = vdwg.mxu0
  %13878 = vmatprep.subr.bf16.mxu0 0
  %13879 = vmatpush1.bf16.msra.mxu0 %v10197
  %13880 = vmatprep.subr.bf16.mxu0 0
  %13881 = vmatpush1.bf16.msra.mxu0 %v10196
  %13882 = vmatprep.subr.bf16.mxu0 0
  %13883 = vmatpush1.bf16.msra.mxu0 %v10195
  %13884 = vmatprep.subr.bf16.mxu0 0
  %13885 = vmatpush1.bf16.msra.mxu0 %v10194
  %13886 = vmatprep.subr.bf16.mxu0 0
  %13887 = vmatpush1.bf16.msra.mxu0 %v10193
  %13888 = vmatprep.subr.bf16.mxu0 0
  %13889 = vmatpush1.bf16.msra.mxu0 %v10192
  %13890 = vmatprep.subr.bf16.mxu0 0
  %13891 = vmatpush1.bf16.msra.mxu0 %v10191
  %13892 = vmatprep.subr.bf16.mxu0 0
  %13893 = vmatpush1.bf16.msra.mxu0 %v10190
  %13894 = vmatprep.subr.bf16.mxu0 0
  %13895 = vmatpush2.bf16.msra.mxu0 %v10205
  %13896 = vmatprep.subr.bf16.mxu0 0
  %13897 = vmatpush2.bf16.msra.mxu0 %v10204
  %13898 = vmatprep.subr.bf16.mxu0 0
  %13899 = vmatpush2.bf16.msra.mxu0 %v10203
  %13900 = vmatprep.subr.bf16.mxu0 0
  %13901 = vmatpush2.bf16.msra.mxu0 %v10202
  %13902 = vmatprep.subr.bf16.mxu0 0
  %13903 = vmatpush2.bf16.msra.mxu0 %v10201
  %13904 = vmatprep.subr.bf16.mxu0 0
  %13905 = vmatpush2.bf16.msra.mxu0 %v10200
  %13906 = vmatprep.subr.bf16.mxu0 0
  %13907 = vmatpush2.bf16.msra.mxu0 %v10199
  %13908 = vmatprep.subr.bf16.mxu0 0
  %13909 = vmatpush2.bf16.msra.mxu0 %v10198
  %13910 = vmatprep.mubr.bf16.mxu0 %v258
  %13911 = vmatmul.mubr.bf16.gmra.mxu0 %v257
  %v13912 = vpop.f32.mrf.mxu0
  %v13913 = vadd.f32 %v13873, %v13912
  %v13914 = vpop.f32.mrf.mxu0
  %v13915 = vpop.f32.mrf.mxu0
  %v13916 = vpop.f32.mrf.mxu0
  %13917 = vdwg.mxu0
  %13918 = vmatprep.subr.bf16.mxu0 0
  %13919 = vmatpush1.bf16.msra.mxu0 %v10213
  %13920 = vmatprep.subr.bf16.mxu0 0
  %13921 = vmatpush1.bf16.msra.mxu0 %v10212
  %13922 = vmatprep.subr.bf16.mxu0 0
  %13923 = vmatpush1.bf16.msra.mxu0 %v10211
  %13924 = vmatprep.subr.bf16.mxu0 0
  %13925 = vmatpush1.bf16.msra.mxu0 %v10210
  %13926 = vmatprep.subr.bf16.mxu0 0
  %13927 = vmatpush1.bf16.msra.mxu0 %v10209
  %13928 = vmatprep.subr.bf16.mxu0 0
  %13929 = vmatpush1.bf16.msra.mxu0 %v10208
  %13930 = vmatprep.subr.bf16.mxu0 0
  %13931 = vmatpush1.bf16.msra.mxu0 %v10207
  %13932 = vmatprep.subr.bf16.mxu0 0
  %13933 = vmatpush1.bf16.msra.mxu0 %v10206
  %13934 = vmatprep.subr.bf16.mxu0 0
  %13935 = vmatpush2.bf16.msra.mxu0 %v10221
  %13936 = vmatprep.subr.bf16.mxu0 0
  %13937 = vmatpush2.bf16.msra.mxu0 %v10220
  %13938 = vmatprep.subr.bf16.mxu0 0
  %13939 = vmatpush2.bf16.msra.mxu0 %v10219
  %13940 = vmatprep.subr.bf16.mxu0 0
  %13941 = vmatpush2.bf16.msra.mxu0 %v10218
  %13942 = vmatprep.subr.bf16.mxu0 0
  %13943 = vmatpush2.bf16.msra.mxu0 %v10217
  %13944 = vmatprep.subr.bf16.mxu0 0
  %13945 = vmatpush2.bf16.msra.mxu0 %v10216
  %13946 = vmatprep.subr.bf16.mxu0 0
  %13947 = vmatpush2.bf16.msra.mxu0 %v10215
  %13948 = vmatprep.subr.bf16.mxu0 0
  %13949 = vmatpush2.bf16.msra.mxu0 %v10214
  %13950 = vmatprep.mubr.bf16.mxu0 %v260
  %13951 = vmatmul.mubr.bf16.gmra.mxu0 %v259
  %v13952 = vpop.f32.mrf.mxu0
  %v13953 = vadd.f32 %v13913, %v13952
  %v13954 = vpop.f32.mrf.mxu0
  %v13955 = vpop.f32.mrf.mxu0
  %v13956 = vpop.f32.mrf.mxu0
  %13957 = vdwg.mxu0
  %13958 = vmatprep.subr.bf16.mxu0 0
  %13959 = vmatpush1.bf16.msra.mxu0 %v10229
  %13960 = vmatprep.subr.bf16.mxu0 0
  %13961 = vmatpush1.bf16.msra.mxu0 %v10228
  %13962 = vmatprep.subr.bf16.mxu0 0
  %13963 = vmatpush1.bf16.msra.mxu0 %v10227
  %13964 = vmatprep.subr.bf16.mxu0 0
  %13965 = vmatpush1.bf16.msra.mxu0 %v10226
  %13966 = vmatprep.subr.bf16.mxu0 0
  %13967 = vmatpush1.bf16.msra.mxu0 %v10225
  %13968 = vmatprep.subr.bf16.mxu0 0
  %13969 = vmatpush1.bf16.msra.mxu0 %v10224
  %13970 = vmatprep.subr.bf16.mxu0 0
  %13971 = vmatpush1.bf16.msra.mxu0 %v10223
  %13972 = vmatprep.subr.bf16.mxu0 0
  %13973 = vmatpush1.bf16.msra.mxu0 %v10222
  %13974 = vmatprep.subr.bf16.mxu0 0
  %13975 = vmatpush2.bf16.msra.mxu0 %v10237
  %13976 = vmatprep.subr.bf16.mxu0 0
  %13977 = vmatpush2.bf16.msra.mxu0 %v10236
  %13978 = vmatprep.subr.bf16.mxu0 0
  %13979 = vmatpush2.bf16.msra.mxu0 %v10235
  %13980 = vmatprep.subr.bf16.mxu0 0
  %13981 = vmatpush2.bf16.msra.mxu0 %v10234
  %13982 = vmatprep.subr.bf16.mxu0 0
  %13983 = vmatpush2.bf16.msra.mxu0 %v10233
  %13984 = vmatprep.subr.bf16.mxu0 0
  %13985 = vmatpush2.bf16.msra.mxu0 %v10232
  %13986 = vmatprep.subr.bf16.mxu0 0
  %13987 = vmatpush2.bf16.msra.mxu0 %v10231
  %13988 = vmatprep.subr.bf16.mxu0 0
  %13989 = vmatpush2.bf16.msra.mxu0 %v10230
  %13990 = vmatprep.mubr.bf16.mxu0 %v262
  %13991 = vmatmul.mubr.bf16.gmra.mxu0 %v261
  %v13992 = vpop.f32.mrf.mxu0
  %v13993 = vadd.f32 %v13953, %v13992
  %v13994 = vpop.f32.mrf.mxu0
  %v13995 = vpop.f32.mrf.mxu0
  %v13996 = vpop.f32.mrf.mxu0
  %13997 = vdwg.mxu0
  %13998 = vmatprep.subr.bf16.mxu0 0
  %13999 = vmatpush1.bf16.msra.mxu0 %v10245
  %14000 = vmatprep.subr.bf16.mxu0 0
  %14001 = vmatpush1.bf16.msra.mxu0 %v10244
  %14002 = vmatprep.subr.bf16.mxu0 0
  %14003 = vmatpush1.bf16.msra.mxu0 %v10243
  %14004 = vmatprep.subr.bf16.mxu0 0
  %14005 = vmatpush1.bf16.msra.mxu0 %v10242
  %14006 = vmatprep.subr.bf16.mxu0 0
  %14007 = vmatpush1.bf16.msra.mxu0 %v10241
  %14008 = vmatprep.subr.bf16.mxu0 0
  %14009 = vmatpush1.bf16.msra.mxu0 %v10240
  %14010 = vmatprep.subr.bf16.mxu0 0
  %14011 = vmatpush1.bf16.msra.mxu0 %v10239
  %14012 = vmatprep.subr.bf16.mxu0 0
  %14013 = vmatpush1.bf16.msra.mxu0 %v10238
  %14014 = vmatprep.subr.bf16.mxu0 0
  %14015 = vmatpush2.bf16.msra.mxu0 %v10253
  %14016 = vmatprep.subr.bf16.mxu0 0
  %14017 = vmatpush2.bf16.msra.mxu0 %v10252
  %14018 = vmatprep.subr.bf16.mxu0 0
  %14019 = vmatpush2.bf16.msra.mxu0 %v10251
  %14020 = vmatprep.subr.bf16.mxu0 0
  %14021 = vmatpush2.bf16.msra.mxu0 %v10250
  %14022 = vmatprep.subr.bf16.mxu0 0
  %14023 = vmatpush2.bf16.msra.mxu0 %v10249
  %14024 = vmatprep.subr.bf16.mxu0 0
  %14025 = vmatpush2.bf16.msra.mxu0 %v10248
  %14026 = vmatprep.subr.bf16.mxu0 0
  %14027 = vmatpush2.bf16.msra.mxu0 %v10247
  %14028 = vmatprep.subr.bf16.mxu0 0
  %14029 = vmatpush2.bf16.msra.mxu0 %v10246
  %14030 = vmatprep.mubr.bf16.mxu0 %v264
  %14031 = vmatmul.mubr.bf16.gmra.mxu0 %v263
  %v14032 = vpop.f32.mrf.mxu0
  %v14033 = vadd.f32 %v13993, %v14032
  %v14034 = vpop.f32.mrf.mxu0
  %v14035 = vpop.f32.mrf.mxu0
  %v14036 = vpop.f32.mrf.mxu0
  %14037 = vdwg.mxu0
  %14038 = vmatprep.subr.bf16.mxu0 0
  %14039 = vmatpush1.bf16.msra.mxu0 %v10261
  %14040 = vmatprep.subr.bf16.mxu0 0
  %14041 = vmatpush1.bf16.msra.mxu0 %v10260
  %14042 = vmatprep.subr.bf16.mxu0 0
  %14043 = vmatpush1.bf16.msra.mxu0 %v10259
  %14044 = vmatprep.subr.bf16.mxu0 0
  %14045 = vmatpush1.bf16.msra.mxu0 %v10258
  %14046 = vmatprep.subr.bf16.mxu0 0
  %14047 = vmatpush1.bf16.msra.mxu0 %v10257
  %14048 = vmatprep.subr.bf16.mxu0 0
  %14049 = vmatpush1.bf16.msra.mxu0 %v10256
  %14050 = vmatprep.subr.bf16.mxu0 0
  %14051 = vmatpush1.bf16.msra.mxu0 %v10255
  %14052 = vmatprep.subr.bf16.mxu0 0
  %14053 = vmatpush1.bf16.msra.mxu0 %v10254
  %14054 = vmatprep.subr.bf16.mxu0 0
  %14055 = vmatpush2.bf16.msra.mxu0 %v10269
  %14056 = vmatprep.subr.bf16.mxu0 0
  %14057 = vmatpush2.bf16.msra.mxu0 %v10268
  %14058 = vmatprep.subr.bf16.mxu0 0
  %14059 = vmatpush2.bf16.msra.mxu0 %v10267
  %14060 = vmatprep.subr.bf16.mxu0 0
  %14061 = vmatpush2.bf16.msra.mxu0 %v10266
  %14062 = vmatprep.subr.bf16.mxu0 0
  %14063 = vmatpush2.bf16.msra.mxu0 %v10265
  %14064 = vmatprep.subr.bf16.mxu0 0
  %14065 = vmatpush2.bf16.msra.mxu0 %v10264
  %14066 = vmatprep.subr.bf16.mxu0 0
  %14067 = vmatpush2.bf16.msra.mxu0 %v10263
  %14068 = vmatprep.subr.bf16.mxu0 0
  %14069 = vmatpush2.bf16.msra.mxu0 %v10262
  %14070 = vmatprep.mubr.bf16.mxu0 %v266
  %14071 = vmatmul.mubr.bf16.gmra.mxu0 %v265
  %v14072 = vpop.f32.mrf.mxu0
  %v14073 = vadd.f32 %v14033, %v14072
  %v14074 = vpop.f32.mrf.mxu0
  %v14075 = vpop.f32.mrf.mxu0
  %v14076 = vpop.f32.mrf.mxu0
  %14077 = vdwg.mxu0
  %14078 = vmatprep.subr.bf16.mxu0 0
  %14079 = vmatpush1.bf16.msra.mxu0 %v10277
  %14080 = vmatprep.subr.bf16.mxu0 0
  %14081 = vmatpush1.bf16.msra.mxu0 %v10276
  %14082 = vmatprep.subr.bf16.mxu0 0
  %14083 = vmatpush1.bf16.msra.mxu0 %v10275
  %14084 = vmatprep.subr.bf16.mxu0 0
  %14085 = vmatpush1.bf16.msra.mxu0 %v10274
  %14086 = vmatprep.subr.bf16.mxu0 0
  %14087 = vmatpush1.bf16.msra.mxu0 %v10273
  %14088 = vmatprep.subr.bf16.mxu0 0
  %14089 = vmatpush1.bf16.msra.mxu0 %v10272
  %14090 = vmatprep.subr.bf16.mxu0 0
  %14091 = vmatpush1.bf16.msra.mxu0 %v10271
  %14092 = vmatprep.subr.bf16.mxu0 0
  %14093 = vmatpush1.bf16.msra.mxu0 %v10270
  %14094 = vmatprep.subr.bf16.mxu0 0
  %14095 = vmatpush2.bf16.msra.mxu0 %v10285
  %14096 = vmatprep.subr.bf16.mxu0 0
  %14097 = vmatpush2.bf16.msra.mxu0 %v10284
  %14098 = vmatprep.subr.bf16.mxu0 0
  %14099 = vmatpush2.bf16.msra.mxu0 %v10283
  %14100 = vmatprep.subr.bf16.mxu0 0
  %14101 = vmatpush2.bf16.msra.mxu0 %v10282
  %14102 = vmatprep.subr.bf16.mxu0 0
  %14103 = vmatpush2.bf16.msra.mxu0 %v10281
  %14104 = vmatprep.subr.bf16.mxu0 0
  %14105 = vmatpush2.bf16.msra.mxu0 %v10280
  %14106 = vmatprep.subr.bf16.mxu0 0
  %14107 = vmatpush2.bf16.msra.mxu0 %v10279
  %14108 = vmatprep.subr.bf16.mxu0 0
  %14109 = vmatpush2.bf16.msra.mxu0 %v10278
  %14110 = vmatprep.mubr.bf16.mxu0 %v268
  %14111 = vmatmul.mubr.bf16.gmra.mxu0 %v267
  %v14112 = vpop.f32.mrf.mxu0
  %v14113 = vadd.f32 %v14073, %v14112
  %v14114 = vpop.f32.mrf.mxu0
  %v14115 = vpop.f32.mrf.mxu0
  %v14116 = vpop.f32.mrf.mxu0
  %14117 = vdwg.mxu0
  %14118 = vmatprep.subr.bf16.mxu0 0
  %14119 = vmatpush1.bf16.msra.mxu0 %v10293
  %14120 = vmatprep.subr.bf16.mxu0 0
  %14121 = vmatpush1.bf16.msra.mxu0 %v10292
  %14122 = vmatprep.subr.bf16.mxu0 0
  %14123 = vmatpush1.bf16.msra.mxu0 %v10291
  %14124 = vmatprep.subr.bf16.mxu0 0
  %14125 = vmatpush1.bf16.msra.mxu0 %v10290
  %14126 = vmatprep.subr.bf16.mxu0 0
  %14127 = vmatpush1.bf16.msra.mxu0 %v10289
  %14128 = vmatprep.subr.bf16.mxu0 0
  %14129 = vmatpush1.bf16.msra.mxu0 %v10288
  %14130 = vmatprep.subr.bf16.mxu0 0
  %14131 = vmatpush1.bf16.msra.mxu0 %v10287
  %14132 = vmatprep.subr.bf16.mxu0 0
  %14133 = vmatpush1.bf16.msra.mxu0 %v10286
  %14134 = vmatprep.subr.bf16.mxu0 0
  %14135 = vmatpush2.bf16.msra.mxu0 %v10301
  %14136 = vmatprep.subr.bf16.mxu0 0
  %14137 = vmatpush2.bf16.msra.mxu0 %v10300
  %14138 = vmatprep.subr.bf16.mxu0 0
  %14139 = vmatpush2.bf16.msra.mxu0 %v10299
  %14140 = vmatprep.subr.bf16.mxu0 0
  %14141 = vmatpush2.bf16.msra.mxu0 %v10298
  %14142 = vmatprep.subr.bf16.mxu0 0
  %14143 = vmatpush2.bf16.msra.mxu0 %v10297
  %14144 = vmatprep.subr.bf16.mxu0 0
  %14145 = vmatpush2.bf16.msra.mxu0 %v10296
  %14146 = vmatprep.subr.bf16.mxu0 0
  %14147 = vmatpush2.bf16.msra.mxu0 %v10295
  %14148 = vmatprep.subr.bf16.mxu0 0
  %14149 = vmatpush2.bf16.msra.mxu0 %v10294
  %14150 = vmatprep.mubr.bf16.mxu0 %v270
  %14151 = vmatmul.mubr.bf16.gmra.mxu0 %v269
  %v14152 = vpop.f32.mrf.mxu0
  %v14153 = vadd.f32 %v14113, %v14152
  %v14154 = vpop.f32.mrf.mxu0
  %v14155 = vpop.f32.mrf.mxu0
  %v14156 = vpop.f32.mrf.mxu0
  %14157 = vdwg.mxu0
  %14158 = vmatprep.subr.bf16.mxu0 0
  %14159 = vmatpush1.bf16.msra.mxu0 %v10309
  %14160 = vmatprep.subr.bf16.mxu0 0
  %14161 = vmatpush1.bf16.msra.mxu0 %v10308
  %14162 = vmatprep.subr.bf16.mxu0 0
  %14163 = vmatpush1.bf16.msra.mxu0 %v10307
  %14164 = vmatprep.subr.bf16.mxu0 0
  %14165 = vmatpush1.bf16.msra.mxu0 %v10306
  %14166 = vmatprep.subr.bf16.mxu0 0
  %14167 = vmatpush1.bf16.msra.mxu0 %v10305
  %14168 = vmatprep.subr.bf16.mxu0 0
  %14169 = vmatpush1.bf16.msra.mxu0 %v10304
  %14170 = vmatprep.subr.bf16.mxu0 0
  %14171 = vmatpush1.bf16.msra.mxu0 %v10303
  %14172 = vmatprep.subr.bf16.mxu0 0
  %14173 = vmatpush1.bf16.msra.mxu0 %v10302
  %14174 = vmatprep.subr.bf16.mxu0 0
  %14175 = vmatpush2.bf16.msra.mxu0 %v10317
  %14176 = vmatprep.subr.bf16.mxu0 0
  %14177 = vmatpush2.bf16.msra.mxu0 %v10316
  %14178 = vmatprep.subr.bf16.mxu0 0
  %14179 = vmatpush2.bf16.msra.mxu0 %v10315
  %14180 = vmatprep.subr.bf16.mxu0 0
  %14181 = vmatpush2.bf16.msra.mxu0 %v10314
  %14182 = vmatprep.subr.bf16.mxu0 0
  %14183 = vmatpush2.bf16.msra.mxu0 %v10313
  %14184 = vmatprep.subr.bf16.mxu0 0
  %14185 = vmatpush2.bf16.msra.mxu0 %v10312
  %14186 = vmatprep.subr.bf16.mxu0 0
  %14187 = vmatpush2.bf16.msra.mxu0 %v10311
  %14188 = vmatprep.subr.bf16.mxu0 0
  %14189 = vmatpush2.bf16.msra.mxu0 %v10310
  %14190 = vmatprep.mubr.bf16.mxu0 %v272
  %14191 = vmatmul.mubr.bf16.gmra.mxu0 %v271
  %v14192 = vpop.f32.mrf.mxu0
  %v14193 = vadd.f32 %v14153, %v14192
  %v14194 = vpop.f32.mrf.mxu0
  %v14195 = vpop.f32.mrf.mxu0
  %v14196 = vpop.f32.mrf.mxu0
  %14197 = vdwg.mxu0
  %14198 = vmatprep.subr.bf16.mxu0 0
  %14199 = vmatpush1.bf16.msra.mxu0 %v10325
  %14200 = vmatprep.subr.bf16.mxu0 0
  %14201 = vmatpush1.bf16.msra.mxu0 %v10324
  %14202 = vmatprep.subr.bf16.mxu0 0
  %14203 = vmatpush1.bf16.msra.mxu0 %v10323
  %14204 = vmatprep.subr.bf16.mxu0 0
  %14205 = vmatpush1.bf16.msra.mxu0 %v10322
  %14206 = vmatprep.subr.bf16.mxu0 0
  %14207 = vmatpush1.bf16.msra.mxu0 %v10321
  %14208 = vmatprep.subr.bf16.mxu0 0
  %14209 = vmatpush1.bf16.msra.mxu0 %v10320
  %14210 = vmatprep.subr.bf16.mxu0 0
  %14211 = vmatpush1.bf16.msra.mxu0 %v10319
  %14212 = vmatprep.subr.bf16.mxu0 0
  %14213 = vmatpush1.bf16.msra.mxu0 %v10318
  %14214 = vmatprep.subr.bf16.mxu0 0
  %14215 = vmatpush2.bf16.msra.mxu0 %v10333
  %14216 = vmatprep.subr.bf16.mxu0 0
  %14217 = vmatpush2.bf16.msra.mxu0 %v10332
  %14218 = vmatprep.subr.bf16.mxu0 0
  %14219 = vmatpush2.bf16.msra.mxu0 %v10331
  %14220 = vmatprep.subr.bf16.mxu0 0
  %14221 = vmatpush2.bf16.msra.mxu0 %v10330
  %14222 = vmatprep.subr.bf16.mxu0 0
  %14223 = vmatpush2.bf16.msra.mxu0 %v10329
  %14224 = vmatprep.subr.bf16.mxu0 0
  %14225 = vmatpush2.bf16.msra.mxu0 %v10328
  %14226 = vmatprep.subr.bf16.mxu0 0
  %14227 = vmatpush2.bf16.msra.mxu0 %v10327
  %14228 = vmatprep.subr.bf16.mxu0 0
  %14229 = vmatpush2.bf16.msra.mxu0 %v10326
  %14230 = vmatprep.mubr.bf16.mxu0 %v274
  %14231 = vmatmul.mubr.bf16.gmra.mxu0 %v273
  %v14232 = vpop.f32.mrf.mxu0
  %v14233 = vadd.f32 %v14193, %v14232
  %v14234 = vpop.f32.mrf.mxu0
  %v14235 = vpop.f32.mrf.mxu0
  %v14236 = vpop.f32.mrf.mxu0
  %14237 = vdwg.mxu0
  %14238 = vmatprep.subr.bf16.mxu0 0
  %14239 = vmatpush1.bf16.msra.mxu0 %v10341
  %14240 = vmatprep.subr.bf16.mxu0 0
  %14241 = vmatpush1.bf16.msra.mxu0 %v10340
  %14242 = vmatprep.subr.bf16.mxu0 0
  %14243 = vmatpush1.bf16.msra.mxu0 %v10339
  %14244 = vmatprep.subr.bf16.mxu0 0
  %14245 = vmatpush1.bf16.msra.mxu0 %v10338
  %14246 = vmatprep.subr.bf16.mxu0 0
  %14247 = vmatpush1.bf16.msra.mxu0 %v10337
  %14248 = vmatprep.subr.bf16.mxu0 0
  %14249 = vmatpush1.bf16.msra.mxu0 %v10336
  %14250 = vmatprep.subr.bf16.mxu0 0
  %14251 = vmatpush1.bf16.msra.mxu0 %v10335
  %14252 = vmatprep.subr.bf16.mxu0 0
  %14253 = vmatpush1.bf16.msra.mxu0 %v10334
  %14254 = vmatprep.subr.bf16.mxu0 0
  %14255 = vmatpush2.bf16.msra.mxu0 %v10349
  %14256 = vmatprep.subr.bf16.mxu0 0
  %14257 = vmatpush2.bf16.msra.mxu0 %v10348
  %14258 = vmatprep.subr.bf16.mxu0 0
  %14259 = vmatpush2.bf16.msra.mxu0 %v10347
  %14260 = vmatprep.subr.bf16.mxu0 0
  %14261 = vmatpush2.bf16.msra.mxu0 %v10346
  %14262 = vmatprep.subr.bf16.mxu0 0
  %14263 = vmatpush2.bf16.msra.mxu0 %v10345
  %14264 = vmatprep.subr.bf16.mxu0 0
  %14265 = vmatpush2.bf16.msra.mxu0 %v10344
  %14266 = vmatprep.subr.bf16.mxu0 0
  %14267 = vmatpush2.bf16.msra.mxu0 %v10343
  %14268 = vmatprep.subr.bf16.mxu0 0
  %14269 = vmatpush2.bf16.msra.mxu0 %v10342
  %14270 = vmatprep.mubr.bf16.mxu0 %v276
  %14271 = vmatmul.mubr.bf16.gmra.mxu0 %v275
  %v14272 = vpop.f32.mrf.mxu0
  %v14273 = vadd.f32 %v14233, %v14272
  %v14274 = vpop.f32.mrf.mxu0
  %v14275 = vpop.f32.mrf.mxu0
  %v14276 = vpop.f32.mrf.mxu0
  %14277 = vdwg.mxu0
  %14278 = vmatprep.subr.bf16.mxu0 0
  %14279 = vmatpush1.bf16.msra.mxu0 %v10357
  %14280 = vmatprep.subr.bf16.mxu0 0
  %14281 = vmatpush1.bf16.msra.mxu0 %v10356
  %14282 = vmatprep.subr.bf16.mxu0 0
  %14283 = vmatpush1.bf16.msra.mxu0 %v10355
  %14284 = vmatprep.subr.bf16.mxu0 0
  %14285 = vmatpush1.bf16.msra.mxu0 %v10354
  %14286 = vmatprep.subr.bf16.mxu0 0
  %14287 = vmatpush1.bf16.msra.mxu0 %v10353
  %14288 = vmatprep.subr.bf16.mxu0 0
  %14289 = vmatpush1.bf16.msra.mxu0 %v10352
  %14290 = vmatprep.subr.bf16.mxu0 0
  %14291 = vmatpush1.bf16.msra.mxu0 %v10351
  %14292 = vmatprep.subr.bf16.mxu0 0
  %14293 = vmatpush1.bf16.msra.mxu0 %v10350
  %14294 = vmatprep.subr.bf16.mxu0 0
  %14295 = vmatpush2.bf16.msra.mxu0 %v10365
  %14296 = vmatprep.subr.bf16.mxu0 0
  %14297 = vmatpush2.bf16.msra.mxu0 %v10364
  %14298 = vmatprep.subr.bf16.mxu0 0
  %14299 = vmatpush2.bf16.msra.mxu0 %v10363
  %14300 = vmatprep.subr.bf16.mxu0 0
  %14301 = vmatpush2.bf16.msra.mxu0 %v10362
  %14302 = vmatprep.subr.bf16.mxu0 0
  %14303 = vmatpush2.bf16.msra.mxu0 %v10361
  %14304 = vmatprep.subr.bf16.mxu0 0
  %14305 = vmatpush2.bf16.msra.mxu0 %v10360
  %14306 = vmatprep.subr.bf16.mxu0 0
  %14307 = vmatpush2.bf16.msra.mxu0 %v10359
  %14308 = vmatprep.subr.bf16.mxu0 0
  %14309 = vmatpush2.bf16.msra.mxu0 %v10358
  %14310 = vmatprep.mubr.bf16.mxu0 %v278
  %14311 = vmatmul.mubr.bf16.gmra.mxu0 %v277
  %v14312 = vpop.f32.mrf.mxu0
  %v14313 = vadd.f32 %v14273, %v14312
  %v14314 = vpop.f32.mrf.mxu0
  %v14315 = vpop.f32.mrf.mxu0
  %v14316 = vpop.f32.mrf.mxu0
  %14317 = vdwg.mxu0
  %14318 = vmatprep.subr.bf16.mxu0 0
  %14319 = vmatpush1.bf16.msra.mxu0 %v10373
  %14320 = vmatprep.subr.bf16.mxu0 0
  %14321 = vmatpush1.bf16.msra.mxu0 %v10372
  %14322 = vmatprep.subr.bf16.mxu0 0
  %14323 = vmatpush1.bf16.msra.mxu0 %v10371
  %14324 = vmatprep.subr.bf16.mxu0 0
  %14325 = vmatpush1.bf16.msra.mxu0 %v10370
  %14326 = vmatprep.subr.bf16.mxu0 0
  %14327 = vmatpush1.bf16.msra.mxu0 %v10369
  %14328 = vmatprep.subr.bf16.mxu0 0
  %14329 = vmatpush1.bf16.msra.mxu0 %v10368
  %14330 = vmatprep.subr.bf16.mxu0 0
  %14331 = vmatpush1.bf16.msra.mxu0 %v10367
  %14332 = vmatprep.subr.bf16.mxu0 0
  %14333 = vmatpush1.bf16.msra.mxu0 %v10366
  %14334 = vmatprep.subr.bf16.mxu0 0
  %14335 = vmatpush2.bf16.msra.mxu0 %v10381
  %14336 = vmatprep.subr.bf16.mxu0 0
  %14337 = vmatpush2.bf16.msra.mxu0 %v10380
  %14338 = vmatprep.subr.bf16.mxu0 0
  %14339 = vmatpush2.bf16.msra.mxu0 %v10379
  %14340 = vmatprep.subr.bf16.mxu0 0
  %14341 = vmatpush2.bf16.msra.mxu0 %v10378
  %14342 = vmatprep.subr.bf16.mxu0 0
  %14343 = vmatpush2.bf16.msra.mxu0 %v10377
  %14344 = vmatprep.subr.bf16.mxu0 0
  %14345 = vmatpush2.bf16.msra.mxu0 %v10376
  %14346 = vmatprep.subr.bf16.mxu0 0
  %14347 = vmatpush2.bf16.msra.mxu0 %v10375
  %14348 = vmatprep.subr.bf16.mxu0 0
  %14349 = vmatpush2.bf16.msra.mxu0 %v10374
  %14350 = vmatprep.mubr.bf16.mxu0 %v280
  %14351 = vmatmul.mubr.bf16.gmra.mxu0 %v279
  %v14352 = vpop.f32.mrf.mxu0
  %v14353 = vadd.f32 %v14313, %v14352
  %v14354 = vpop.f32.mrf.mxu0
  %v14355 = vpop.f32.mrf.mxu0
  %v14356 = vpop.f32.mrf.mxu0
  %14357 = vdwg.mxu0
  %14358 = vmatprep.subr.bf16.mxu0 0
  %14359 = vmatpush1.bf16.msra.mxu0 %v10389
  %14360 = vmatprep.subr.bf16.mxu0 0
  %14361 = vmatpush1.bf16.msra.mxu0 %v10388
  %14362 = vmatprep.subr.bf16.mxu0 0
  %14363 = vmatpush1.bf16.msra.mxu0 %v10387
  %14364 = vmatprep.subr.bf16.mxu0 0
  %14365 = vmatpush1.bf16.msra.mxu0 %v10386
  %14366 = vmatprep.subr.bf16.mxu0 0
  %14367 = vmatpush1.bf16.msra.mxu0 %v10385
  %14368 = vmatprep.subr.bf16.mxu0 0
  %14369 = vmatpush1.bf16.msra.mxu0 %v10384
  %14370 = vmatprep.subr.bf16.mxu0 0
  %14371 = vmatpush1.bf16.msra.mxu0 %v10383
  %14372 = vmatprep.subr.bf16.mxu0 0
  %14373 = vmatpush1.bf16.msra.mxu0 %v10382
  %14374 = vmatprep.subr.bf16.mxu0 0
  %14375 = vmatpush2.bf16.msra.mxu0 %v10397
  %14376 = vmatprep.subr.bf16.mxu0 0
  %14377 = vmatpush2.bf16.msra.mxu0 %v10396
  %14378 = vmatprep.subr.bf16.mxu0 0
  %14379 = vmatpush2.bf16.msra.mxu0 %v10395
  %14380 = vmatprep.subr.bf16.mxu0 0
  %14381 = vmatpush2.bf16.msra.mxu0 %v10394
  %14382 = vmatprep.subr.bf16.mxu0 0
  %14383 = vmatpush2.bf16.msra.mxu0 %v10393
  %14384 = vmatprep.subr.bf16.mxu0 0
  %14385 = vmatpush2.bf16.msra.mxu0 %v10392
  %14386 = vmatprep.subr.bf16.mxu0 0
  %14387 = vmatpush2.bf16.msra.mxu0 %v10391
  %14388 = vmatprep.subr.bf16.mxu0 0
  %14389 = vmatpush2.bf16.msra.mxu0 %v10390
  %14390 = vmatprep.mubr.bf16.mxu0 %v282
  %14391 = vmatmul.mubr.bf16.gmra.mxu0 %v281
  %v14392 = vpop.f32.mrf.mxu0
  %v14393 = vadd.f32 %v14353, %v14392
  %v14394 = vpop.f32.mrf.mxu0
  %v14395 = vpop.f32.mrf.mxu0
  %v14396 = vpop.f32.mrf.mxu0
  %14397 = vdwg.mxu0
  %14398 = vmatprep.subr.bf16.mxu0 0
  %14399 = vmatpush1.bf16.msra.mxu0 %v10405
  %14400 = vmatprep.subr.bf16.mxu0 0
  %14401 = vmatpush1.bf16.msra.mxu0 %v10404
  %14402 = vmatprep.subr.bf16.mxu0 0
  %14403 = vmatpush1.bf16.msra.mxu0 %v10403
  %14404 = vmatprep.subr.bf16.mxu0 0
  %14405 = vmatpush1.bf16.msra.mxu0 %v10402
  %14406 = vmatprep.subr.bf16.mxu0 0
  %14407 = vmatpush1.bf16.msra.mxu0 %v10401
  %14408 = vmatprep.subr.bf16.mxu0 0
  %14409 = vmatpush1.bf16.msra.mxu0 %v10400
  %14410 = vmatprep.subr.bf16.mxu0 0
  %14411 = vmatpush1.bf16.msra.mxu0 %v10399
  %14412 = vmatprep.subr.bf16.mxu0 0
  %14413 = vmatpush1.bf16.msra.mxu0 %v10398
  %14414 = vmatprep.subr.bf16.mxu0 0
  %14415 = vmatpush2.bf16.msra.mxu0 %v10413
  %14416 = vmatprep.subr.bf16.mxu0 0
  %14417 = vmatpush2.bf16.msra.mxu0 %v10412
  %14418 = vmatprep.subr.bf16.mxu0 0
  %14419 = vmatpush2.bf16.msra.mxu0 %v10411
  %14420 = vmatprep.subr.bf16.mxu0 0
  %14421 = vmatpush2.bf16.msra.mxu0 %v10410
  %14422 = vmatprep.subr.bf16.mxu0 0
  %14423 = vmatpush2.bf16.msra.mxu0 %v10409
  %14424 = vmatprep.subr.bf16.mxu0 0
  %14425 = vmatpush2.bf16.msra.mxu0 %v10408
  %14426 = vmatprep.subr.bf16.mxu0 0
  %14427 = vmatpush2.bf16.msra.mxu0 %v10407
  %14428 = vmatprep.subr.bf16.mxu0 0
  %14429 = vmatpush2.bf16.msra.mxu0 %v10406
  %14430 = vmatprep.mubr.bf16.mxu0 %v284
  %14431 = vmatmul.mubr.bf16.gmra.mxu0 %v283
  %v14432 = vpop.f32.mrf.mxu0
  %v14433 = vadd.f32 %v14393, %v14432
  %v14434 = vpop.f32.mrf.mxu0
  %v14435 = vpop.f32.mrf.mxu0
  %v14436 = vpop.f32.mrf.mxu0
  %14437 = vdwg.mxu0
  %14438 = vmatprep.subr.bf16.mxu0 0
  %14439 = vmatpush1.bf16.msra.mxu0 %v10421
  %14440 = vmatprep.subr.bf16.mxu0 0
  %14441 = vmatpush1.bf16.msra.mxu0 %v10420
  %14442 = vmatprep.subr.bf16.mxu0 0
  %14443 = vmatpush1.bf16.msra.mxu0 %v10419
  %14444 = vmatprep.subr.bf16.mxu0 0
  %14445 = vmatpush1.bf16.msra.mxu0 %v10418
  %14446 = vmatprep.subr.bf16.mxu0 0
  %14447 = vmatpush1.bf16.msra.mxu0 %v10417
  %14448 = vmatprep.subr.bf16.mxu0 0
  %14449 = vmatpush1.bf16.msra.mxu0 %v10416
  %14450 = vmatprep.subr.bf16.mxu0 0
  %14451 = vmatpush1.bf16.msra.mxu0 %v10415
  %14452 = vmatprep.subr.bf16.mxu0 0
  %14453 = vmatpush1.bf16.msra.mxu0 %v10414
  %14454 = vmatprep.subr.bf16.mxu0 0
  %14455 = vmatpush2.bf16.msra.mxu0 %v10429
  %14456 = vmatprep.subr.bf16.mxu0 0
  %14457 = vmatpush2.bf16.msra.mxu0 %v10428
  %14458 = vmatprep.subr.bf16.mxu0 0
  %14459 = vmatpush2.bf16.msra.mxu0 %v10427
  %14460 = vmatprep.subr.bf16.mxu0 0
  %14461 = vmatpush2.bf16.msra.mxu0 %v10426
  %14462 = vmatprep.subr.bf16.mxu0 0
  %14463 = vmatpush2.bf16.msra.mxu0 %v10425
  %14464 = vmatprep.subr.bf16.mxu0 0
  %14465 = vmatpush2.bf16.msra.mxu0 %v10424
  %14466 = vmatprep.subr.bf16.mxu0 0
  %14467 = vmatpush2.bf16.msra.mxu0 %v10423
  %14468 = vmatprep.subr.bf16.mxu0 0
  %14469 = vmatpush2.bf16.msra.mxu0 %v10422
  %14470 = vmatprep.mubr.bf16.mxu0 %v286
  %14471 = vmatmul.mubr.bf16.gmra.mxu0 %v285
  %v14472 = vpop.f32.mrf.mxu0
  %v14473 = vadd.f32 %v14433, %v14472
  %v14474 = vpop.f32.mrf.mxu0
  %v14475 = vpop.f32.mrf.mxu0
  %v14476 = vpop.f32.mrf.mxu0
  %14477 = vdwg.mxu0
  %14478 = vmatprep.subr.bf16.mxu0 0
  %14479 = vmatpush1.bf16.msra.mxu0 %v10437
  %14480 = vmatprep.subr.bf16.mxu0 0
  %14481 = vmatpush1.bf16.msra.mxu0 %v10436
  %14482 = vmatprep.subr.bf16.mxu0 0
  %14483 = vmatpush1.bf16.msra.mxu0 %v10435
  %14484 = vmatprep.subr.bf16.mxu0 0
  %14485 = vmatpush1.bf16.msra.mxu0 %v10434
  %14486 = vmatprep.subr.bf16.mxu0 0
  %14487 = vmatpush1.bf16.msra.mxu0 %v10433
  %14488 = vmatprep.subr.bf16.mxu0 0
  %14489 = vmatpush1.bf16.msra.mxu0 %v10432
  %14490 = vmatprep.subr.bf16.mxu0 0
  %14491 = vmatpush1.bf16.msra.mxu0 %v10431
  %14492 = vmatprep.subr.bf16.mxu0 0
  %14493 = vmatpush1.bf16.msra.mxu0 %v10430
  %14494 = vmatprep.subr.bf16.mxu0 0
  %14495 = vmatpush2.bf16.msra.mxu0 %v10445
  %14496 = vmatprep.subr.bf16.mxu0 0
  %14497 = vmatpush2.bf16.msra.mxu0 %v10444
  %14498 = vmatprep.subr.bf16.mxu0 0
  %14499 = vmatpush2.bf16.msra.mxu0 %v10443
  %14500 = vmatprep.subr.bf16.mxu0 0
  %14501 = vmatpush2.bf16.msra.mxu0 %v10442
  %14502 = vmatprep.subr.bf16.mxu0 0
  %14503 = vmatpush2.bf16.msra.mxu0 %v10441
  %14504 = vmatprep.subr.bf16.mxu0 0
  %14505 = vmatpush2.bf16.msra.mxu0 %v10440
  %14506 = vmatprep.subr.bf16.mxu0 0
  %14507 = vmatpush2.bf16.msra.mxu0 %v10439
  %14508 = vmatprep.subr.bf16.mxu0 0
  %14509 = vmatpush2.bf16.msra.mxu0 %v10438
  %14510 = vmatprep.mubr.bf16.mxu0 %v288
  %14511 = vmatmul.mubr.bf16.gmra.mxu0 %v287
  %v14512 = vpop.f32.mrf.mxu0
  %v14513 = vadd.f32 %v14473, %v14512
  %v14514 = vpop.f32.mrf.mxu0
  %v14515 = vpop.f32.mrf.mxu0
  %v14516 = vpop.f32.mrf.mxu0
  %14517 = vdwg.mxu0
  %14518 = vmatprep.subr.bf16.mxu0 0
  %14519 = vmatpush1.bf16.msra.mxu0 %v10453
  %14520 = vmatprep.subr.bf16.mxu0 0
  %14521 = vmatpush1.bf16.msra.mxu0 %v10452
  %14522 = vmatprep.subr.bf16.mxu0 0
  %14523 = vmatpush1.bf16.msra.mxu0 %v10451
  %14524 = vmatprep.subr.bf16.mxu0 0
  %14525 = vmatpush1.bf16.msra.mxu0 %v10450
  %14526 = vmatprep.subr.bf16.mxu0 0
  %14527 = vmatpush1.bf16.msra.mxu0 %v10449
  %14528 = vmatprep.subr.bf16.mxu0 0
  %14529 = vmatpush1.bf16.msra.mxu0 %v10448
  %14530 = vmatprep.subr.bf16.mxu0 0
  %14531 = vmatpush1.bf16.msra.mxu0 %v10447
  %14532 = vmatprep.subr.bf16.mxu0 0
  %14533 = vmatpush1.bf16.msra.mxu0 %v10446
  %14534 = vmatprep.subr.bf16.mxu0 0
  %14535 = vmatpush2.bf16.msra.mxu0 %v10461
  %14536 = vmatprep.subr.bf16.mxu0 0
  %14537 = vmatpush2.bf16.msra.mxu0 %v10460
  %14538 = vmatprep.subr.bf16.mxu0 0
  %14539 = vmatpush2.bf16.msra.mxu0 %v10459
  %14540 = vmatprep.subr.bf16.mxu0 0
  %14541 = vmatpush2.bf16.msra.mxu0 %v10458
  %14542 = vmatprep.subr.bf16.mxu0 0
  %14543 = vmatpush2.bf16.msra.mxu0 %v10457
  %14544 = vmatprep.subr.bf16.mxu0 0
  %14545 = vmatpush2.bf16.msra.mxu0 %v10456
  %14546 = vmatprep.subr.bf16.mxu0 0
  %14547 = vmatpush2.bf16.msra.mxu0 %v10455
  %14548 = vmatprep.subr.bf16.mxu0 0
  %14549 = vmatpush2.bf16.msra.mxu0 %v10454
  %14550 = vmatprep.mubr.bf16.mxu0 %v290
  %14551 = vmatmul.mubr.bf16.gmra.mxu0 %v289
  %v14552 = vpop.f32.mrf.mxu0
  %v14553 = vadd.f32 %v14513, %v14552
  %v14554 = vpop.f32.mrf.mxu0
  %v14555 = vpop.f32.mrf.mxu0
  %v14556 = vpop.f32.mrf.mxu0
  %14557 = vdwg.mxu0
  %14558 = vmatprep.subr.bf16.mxu0 0
  %14559 = vmatpush1.bf16.msra.mxu0 %v10469
  %14560 = vmatprep.subr.bf16.mxu0 0
  %14561 = vmatpush1.bf16.msra.mxu0 %v10468
  %14562 = vmatprep.subr.bf16.mxu0 0
  %14563 = vmatpush1.bf16.msra.mxu0 %v10467
  %14564 = vmatprep.subr.bf16.mxu0 0
  %14565 = vmatpush1.bf16.msra.mxu0 %v10466
  %14566 = vmatprep.subr.bf16.mxu0 0
  %14567 = vmatpush1.bf16.msra.mxu0 %v10465
  %14568 = vmatprep.subr.bf16.mxu0 0
  %14569 = vmatpush1.bf16.msra.mxu0 %v10464
  %14570 = vmatprep.subr.bf16.mxu0 0
  %14571 = vmatpush1.bf16.msra.mxu0 %v10463
  %14572 = vmatprep.subr.bf16.mxu0 0
  %14573 = vmatpush1.bf16.msra.mxu0 %v10462
  %14574 = vmatprep.subr.bf16.mxu0 0
  %14575 = vmatpush2.bf16.msra.mxu0 %v10477
  %14576 = vmatprep.subr.bf16.mxu0 0
  %14577 = vmatpush2.bf16.msra.mxu0 %v10476
  %14578 = vmatprep.subr.bf16.mxu0 0
  %14579 = vmatpush2.bf16.msra.mxu0 %v10475
  %14580 = vmatprep.subr.bf16.mxu0 0
  %14581 = vmatpush2.bf16.msra.mxu0 %v10474
  %14582 = vmatprep.subr.bf16.mxu0 0
  %14583 = vmatpush2.bf16.msra.mxu0 %v10473
  %14584 = vmatprep.subr.bf16.mxu0 0
  %14585 = vmatpush2.bf16.msra.mxu0 %v10472
  %14586 = vmatprep.subr.bf16.mxu0 0
  %14587 = vmatpush2.bf16.msra.mxu0 %v10471
  %14588 = vmatprep.subr.bf16.mxu0 0
  %14589 = vmatpush2.bf16.msra.mxu0 %v10470
  %14590 = vmatprep.mubr.bf16.mxu0 %v292
  %14591 = vmatmul.mubr.bf16.gmra.mxu0 %v291
  %v14592 = vpop.f32.mrf.mxu0
  %v14593 = vadd.f32 %v14553, %v14592
  %v14594 = vpop.f32.mrf.mxu0
  %v14595 = vpop.f32.mrf.mxu0
  %v14596 = vpop.f32.mrf.mxu0
  %14597 = vdwg.mxu0
  %14598 = vmatprep.subr.bf16.mxu0 0
  %14599 = vmatpush1.bf16.msra.mxu0 %v10485
  %14600 = vmatprep.subr.bf16.mxu0 0
  %14601 = vmatpush1.bf16.msra.mxu0 %v10484
  %14602 = vmatprep.subr.bf16.mxu0 0
  %14603 = vmatpush1.bf16.msra.mxu0 %v10483
  %14604 = vmatprep.subr.bf16.mxu0 0
  %14605 = vmatpush1.bf16.msra.mxu0 %v10482
  %14606 = vmatprep.subr.bf16.mxu0 0
  %14607 = vmatpush1.bf16.msra.mxu0 %v10481
  %14608 = vmatprep.subr.bf16.mxu0 0
  %14609 = vmatpush1.bf16.msra.mxu0 %v10480
  %14610 = vmatprep.subr.bf16.mxu0 0
  %14611 = vmatpush1.bf16.msra.mxu0 %v10479
  %14612 = vmatprep.subr.bf16.mxu0 0
  %14613 = vmatpush1.bf16.msra.mxu0 %v10478
  %14614 = vmatprep.subr.bf16.mxu0 0
  %14615 = vmatpush2.bf16.msra.mxu0 %v10493
  %14616 = vmatprep.subr.bf16.mxu0 0
  %14617 = vmatpush2.bf16.msra.mxu0 %v10492
  %14618 = vmatprep.subr.bf16.mxu0 0
  %14619 = vmatpush2.bf16.msra.mxu0 %v10491
  %14620 = vmatprep.subr.bf16.mxu0 0
  %14621 = vmatpush2.bf16.msra.mxu0 %v10490
  %14622 = vmatprep.subr.bf16.mxu0 0
  %14623 = vmatpush2.bf16.msra.mxu0 %v10489
  %14624 = vmatprep.subr.bf16.mxu0 0
  %14625 = vmatpush2.bf16.msra.mxu0 %v10488
  %14626 = vmatprep.subr.bf16.mxu0 0
  %14627 = vmatpush2.bf16.msra.mxu0 %v10487
  %14628 = vmatprep.subr.bf16.mxu0 0
  %14629 = vmatpush2.bf16.msra.mxu0 %v10486
  %14630 = vmatprep.mubr.bf16.mxu0 %v294
  %14631 = vmatmul.mubr.bf16.gmra.mxu0 %v293
  %v14632 = vpop.f32.mrf.mxu0
  %v14633 = vadd.f32 %v14593, %v14632
  %v14634 = vpop.f32.mrf.mxu0
  %v14635 = vpop.f32.mrf.mxu0
  %v14636 = vpop.f32.mrf.mxu0
  %14637 = vdwg.mxu0
  %14638 = vmatprep.subr.bf16.mxu0 0
  %14639 = vmatpush1.bf16.msra.mxu0 %v10501
  %14640 = vmatprep.subr.bf16.mxu0 0
  %14641 = vmatpush1.bf16.msra.mxu0 %v10500
  %14642 = vmatprep.subr.bf16.mxu0 0
  %14643 = vmatpush1.bf16.msra.mxu0 %v10499
  %14644 = vmatprep.subr.bf16.mxu0 0
  %14645 = vmatpush1.bf16.msra.mxu0 %v10498
  %14646 = vmatprep.subr.bf16.mxu0 0
  %14647 = vmatpush1.bf16.msra.mxu0 %v10497
  %14648 = vmatprep.subr.bf16.mxu0 0
  %14649 = vmatpush1.bf16.msra.mxu0 %v10496
  %14650 = vmatprep.subr.bf16.mxu0 0
  %14651 = vmatpush1.bf16.msra.mxu0 %v10495
  %14652 = vmatprep.subr.bf16.mxu0 0
  %14653 = vmatpush1.bf16.msra.mxu0 %v10494
  %14654 = vmatprep.subr.bf16.mxu0 0
  %14655 = vmatpush2.bf16.msra.mxu0 %v10509
  %14656 = vmatprep.subr.bf16.mxu0 0
  %14657 = vmatpush2.bf16.msra.mxu0 %v10508
  %14658 = vmatprep.subr.bf16.mxu0 0
  %14659 = vmatpush2.bf16.msra.mxu0 %v10507
  %14660 = vmatprep.subr.bf16.mxu0 0
  %14661 = vmatpush2.bf16.msra.mxu0 %v10506
  %14662 = vmatprep.subr.bf16.mxu0 0
  %14663 = vmatpush2.bf16.msra.mxu0 %v10505
  %14664 = vmatprep.subr.bf16.mxu0 0
  %14665 = vmatpush2.bf16.msra.mxu0 %v10504
  %14666 = vmatprep.subr.bf16.mxu0 0
  %14667 = vmatpush2.bf16.msra.mxu0 %v10503
  %14668 = vmatprep.subr.bf16.mxu0 0
  %14669 = vmatpush2.bf16.msra.mxu0 %v10502
  %14670 = vmatprep.mubr.bf16.mxu0 %v296
  %14671 = vmatmul.mubr.bf16.gmra.mxu0 %v295
  %v14672 = vpop.f32.mrf.mxu0
  %v14673 = vadd.f32 %v14633, %v14672
  %v14674 = vpop.f32.mrf.mxu0
  %v14675 = vpop.f32.mrf.mxu0
  %v14676 = vpop.f32.mrf.mxu0
  %14677 = vdwg.mxu0
  %14678 = vmatprep.subr.bf16.mxu0 0
  %14679 = vmatpush1.bf16.msra.mxu0 %v10517
  %14680 = vmatprep.subr.bf16.mxu0 0
  %14681 = vmatpush1.bf16.msra.mxu0 %v10516
  %14682 = vmatprep.subr.bf16.mxu0 0
  %14683 = vmatpush1.bf16.msra.mxu0 %v10515
  %14684 = vmatprep.subr.bf16.mxu0 0
  %14685 = vmatpush1.bf16.msra.mxu0 %v10514
  %14686 = vmatprep.subr.bf16.mxu0 0
  %14687 = vmatpush1.bf16.msra.mxu0 %v10513
  %14688 = vmatprep.subr.bf16.mxu0 0
  %14689 = vmatpush1.bf16.msra.mxu0 %v10512
  %14690 = vmatprep.subr.bf16.mxu0 0
  %14691 = vmatpush1.bf16.msra.mxu0 %v10511
  %14692 = vmatprep.subr.bf16.mxu0 0
  %14693 = vmatpush1.bf16.msra.mxu0 %v10510
  %14694 = vmatprep.subr.bf16.mxu0 0
  %14695 = vmatpush2.bf16.msra.mxu0 %v10525
  %14696 = vmatprep.subr.bf16.mxu0 0
  %14697 = vmatpush2.bf16.msra.mxu0 %v10524
  %14698 = vmatprep.subr.bf16.mxu0 0
  %14699 = vmatpush2.bf16.msra.mxu0 %v10523
  %14700 = vmatprep.subr.bf16.mxu0 0
  %14701 = vmatpush2.bf16.msra.mxu0 %v10522
  %14702 = vmatprep.subr.bf16.mxu0 0
  %14703 = vmatpush2.bf16.msra.mxu0 %v10521
  %14704 = vmatprep.subr.bf16.mxu0 0
  %14705 = vmatpush2.bf16.msra.mxu0 %v10520
  %14706 = vmatprep.subr.bf16.mxu0 0
  %14707 = vmatpush2.bf16.msra.mxu0 %v10519
  %14708 = vmatprep.subr.bf16.mxu0 0
  %14709 = vmatpush2.bf16.msra.mxu0 %v10518
  %14710 = vmatprep.mubr.bf16.mxu0 %v298
  %14711 = vmatmul.mubr.bf16.gmra.mxu0 %v297
  %v14712 = vpop.f32.mrf.mxu0
  %v14713 = vadd.f32 %v14673, %v14712
  %v14714 = vpop.f32.mrf.mxu0
  %v14715 = vpop.f32.mrf.mxu0
  %v14716 = vpop.f32.mrf.mxu0
  %14717 = vdwg.mxu0
  %14718 = vmatprep.subr.bf16.mxu0 0
  %14719 = vmatpush1.bf16.msra.mxu0 %v10533
  %14720 = vmatprep.subr.bf16.mxu0 0
  %14721 = vmatpush1.bf16.msra.mxu0 %v10532
  %14722 = vmatprep.subr.bf16.mxu0 0
  %14723 = vmatpush1.bf16.msra.mxu0 %v10531
  %14724 = vmatprep.subr.bf16.mxu0 0
  %14725 = vmatpush1.bf16.msra.mxu0 %v10530
  %14726 = vmatprep.subr.bf16.mxu0 0
  %14727 = vmatpush1.bf16.msra.mxu0 %v10529
  %14728 = vmatprep.subr.bf16.mxu0 0
  %14729 = vmatpush1.bf16.msra.mxu0 %v10528
  %14730 = vmatprep.subr.bf16.mxu0 0
  %14731 = vmatpush1.bf16.msra.mxu0 %v10527
  %14732 = vmatprep.subr.bf16.mxu0 0
  %14733 = vmatpush1.bf16.msra.mxu0 %v10526
  %14734 = vmatprep.subr.bf16.mxu0 0
  %14735 = vmatpush2.bf16.msra.mxu0 %v10541
  %14736 = vmatprep.subr.bf16.mxu0 0
  %14737 = vmatpush2.bf16.msra.mxu0 %v10540
  %14738 = vmatprep.subr.bf16.mxu0 0
  %14739 = vmatpush2.bf16.msra.mxu0 %v10539
  %14740 = vmatprep.subr.bf16.mxu0 0
  %14741 = vmatpush2.bf16.msra.mxu0 %v10538
  %14742 = vmatprep.subr.bf16.mxu0 0
  %14743 = vmatpush2.bf16.msra.mxu0 %v10537
  %14744 = vmatprep.subr.bf16.mxu0 0
  %14745 = vmatpush2.bf16.msra.mxu0 %v10536
  %14746 = vmatprep.subr.bf16.mxu0 0
  %14747 = vmatpush2.bf16.msra.mxu0 %v10535
  %14748 = vmatprep.subr.bf16.mxu0 0
  %14749 = vmatpush2.bf16.msra.mxu0 %v10534
  %14750 = vmatprep.mubr.bf16.mxu0 %v300
  %14751 = vmatmul.mubr.bf16.gmra.mxu0 %v299
  %v14752 = vpop.f32.mrf.mxu0
  %v14753 = vadd.f32 %v14713, %v14752
  %v14754 = vpop.f32.mrf.mxu0
  %v14755 = vpop.f32.mrf.mxu0
  %v14756 = vpop.f32.mrf.mxu0
  %14757 = vdwg.mxu0
  %14758 = vmatprep.subr.bf16.mxu0 0
  %14759 = vmatpush1.bf16.msra.mxu0 %v10549
  %14760 = vmatprep.subr.bf16.mxu0 0
  %14761 = vmatpush1.bf16.msra.mxu0 %v10548
  %14762 = vmatprep.subr.bf16.mxu0 0
  %14763 = vmatpush1.bf16.msra.mxu0 %v10547
  %14764 = vmatprep.subr.bf16.mxu0 0
  %14765 = vmatpush1.bf16.msra.mxu0 %v10546
  %14766 = vmatprep.subr.bf16.mxu0 0
  %14767 = vmatpush1.bf16.msra.mxu0 %v10545
  %14768 = vmatprep.subr.bf16.mxu0 0
  %14769 = vmatpush1.bf16.msra.mxu0 %v10544
  %14770 = vmatprep.subr.bf16.mxu0 0
  %14771 = vmatpush1.bf16.msra.mxu0 %v10543
  %14772 = vmatprep.subr.bf16.mxu0 0
  %14773 = vmatpush1.bf16.msra.mxu0 %v10542
  %14774 = vmatprep.subr.bf16.mxu0 0
  %14775 = vmatpush2.bf16.msra.mxu0 %v10557
  %14776 = vmatprep.subr.bf16.mxu0 0
  %14777 = vmatpush2.bf16.msra.mxu0 %v10556
  %14778 = vmatprep.subr.bf16.mxu0 0
  %14779 = vmatpush2.bf16.msra.mxu0 %v10555
  %14780 = vmatprep.subr.bf16.mxu0 0
  %14781 = vmatpush2.bf16.msra.mxu0 %v10554
  %14782 = vmatprep.subr.bf16.mxu0 0
  %14783 = vmatpush2.bf16.msra.mxu0 %v10553
  %14784 = vmatprep.subr.bf16.mxu0 0
  %14785 = vmatpush2.bf16.msra.mxu0 %v10552
  %14786 = vmatprep.subr.bf16.mxu0 0
  %14787 = vmatpush2.bf16.msra.mxu0 %v10551
  %14788 = vmatprep.subr.bf16.mxu0 0
  %14789 = vmatpush2.bf16.msra.mxu0 %v10550
  %14790 = vmatprep.mubr.bf16.mxu0 %v302
  %14791 = vmatmul.mubr.bf16.gmra.mxu0 %v301
  %v14792 = vpop.f32.mrf.mxu0
  %v14793 = vadd.f32 %v14753, %v14792
  %v14794 = vpop.f32.mrf.mxu0
  %v14795 = vpop.f32.mrf.mxu0
  %v14796 = vpop.f32.mrf.mxu0
  %14797 = vdwg.mxu0
  %14798 = vmatprep.subr.bf16.mxu0 0
  %14799 = vmatpush1.bf16.msra.mxu0 %v10565
  %14800 = vmatprep.subr.bf16.mxu0 0
  %14801 = vmatpush1.bf16.msra.mxu0 %v10564
  %14802 = vmatprep.subr.bf16.mxu0 0
  %14803 = vmatpush1.bf16.msra.mxu0 %v10563
  %14804 = vmatprep.subr.bf16.mxu0 0
  %14805 = vmatpush1.bf16.msra.mxu0 %v10562
  %14806 = vmatprep.subr.bf16.mxu0 0
  %14807 = vmatpush1.bf16.msra.mxu0 %v10561
  %14808 = vmatprep.subr.bf16.mxu0 0
  %14809 = vmatpush1.bf16.msra.mxu0 %v10560
  %14810 = vmatprep.subr.bf16.mxu0 0
  %14811 = vmatpush1.bf16.msra.mxu0 %v10559
  %14812 = vmatprep.subr.bf16.mxu0 0
  %14813 = vmatpush1.bf16.msra.mxu0 %v10558
  %14814 = vmatprep.subr.bf16.mxu0 0
  %14815 = vmatpush2.bf16.msra.mxu0 %v10573
  %14816 = vmatprep.subr.bf16.mxu0 0
  %14817 = vmatpush2.bf16.msra.mxu0 %v10572
  %14818 = vmatprep.subr.bf16.mxu0 0
  %14819 = vmatpush2.bf16.msra.mxu0 %v10571
  %14820 = vmatprep.subr.bf16.mxu0 0
  %14821 = vmatpush2.bf16.msra.mxu0 %v10570
  %14822 = vmatprep.subr.bf16.mxu0 0
  %14823 = vmatpush2.bf16.msra.mxu0 %v10569
  %14824 = vmatprep.subr.bf16.mxu0 0
  %14825 = vmatpush2.bf16.msra.mxu0 %v10568
  %14826 = vmatprep.subr.bf16.mxu0 0
  %14827 = vmatpush2.bf16.msra.mxu0 %v10567
  %14828 = vmatprep.subr.bf16.mxu0 0
  %14829 = vmatpush2.bf16.msra.mxu0 %v10566
  %14830 = vmatprep.mubr.bf16.mxu0 %v304
  %14831 = vmatmul.mubr.bf16.gmra.mxu0 %v303
  %v14832 = vpop.f32.mrf.mxu0
  %v14833 = vadd.f32 %v14793, %v14832
  %v14834 = vpop.f32.mrf.mxu0
  %v14835 = vpop.f32.mrf.mxu0
  %v14836 = vpop.f32.mrf.mxu0
  %14837 = vdwg.mxu0
  %14838 = vmatprep.subr.bf16.mxu0 0
  %14839 = vmatpush1.bf16.msra.mxu0 %v10581
  %14840 = vmatprep.subr.bf16.mxu0 0
  %14841 = vmatpush1.bf16.msra.mxu0 %v10580
  %14842 = vmatprep.subr.bf16.mxu0 0
  %14843 = vmatpush1.bf16.msra.mxu0 %v10579
  %14844 = vmatprep.subr.bf16.mxu0 0
  %14845 = vmatpush1.bf16.msra.mxu0 %v10578
  %14846 = vmatprep.subr.bf16.mxu0 0
  %14847 = vmatpush1.bf16.msra.mxu0 %v10577
  %14848 = vmatprep.subr.bf16.mxu0 0
  %14849 = vmatpush1.bf16.msra.mxu0 %v10576
  %14850 = vmatprep.subr.bf16.mxu0 0
  %14851 = vmatpush1.bf16.msra.mxu0 %v10575
  %14852 = vmatprep.subr.bf16.mxu0 0
  %14853 = vmatpush1.bf16.msra.mxu0 %v10574
  %14854 = vmatprep.subr.bf16.mxu0 0
  %14855 = vmatpush2.bf16.msra.mxu0 %v10589
  %14856 = vmatprep.subr.bf16.mxu0 0
  %14857 = vmatpush2.bf16.msra.mxu0 %v10588
  %14858 = vmatprep.subr.bf16.mxu0 0
  %14859 = vmatpush2.bf16.msra.mxu0 %v10587
  %14860 = vmatprep.subr.bf16.mxu0 0
  %14861 = vmatpush2.bf16.msra.mxu0 %v10586
  %14862 = vmatprep.subr.bf16.mxu0 0
  %14863 = vmatpush2.bf16.msra.mxu0 %v10585
  %14864 = vmatprep.subr.bf16.mxu0 0
  %14865 = vmatpush2.bf16.msra.mxu0 %v10584
  %14866 = vmatprep.subr.bf16.mxu0 0
  %14867 = vmatpush2.bf16.msra.mxu0 %v10583
  %14868 = vmatprep.subr.bf16.mxu0 0
  %14869 = vmatpush2.bf16.msra.mxu0 %v10582
  %14870 = vmatprep.mubr.bf16.mxu0 %v306
  %14871 = vmatmul.mubr.bf16.gmra.mxu0 %v305
  %v14872 = vpop.f32.mrf.mxu0
  %v14873 = vadd.f32 %v14833, %v14872
  %v14874 = vpop.f32.mrf.mxu0
  %v14875 = vpop.f32.mrf.mxu0
  %v14876 = vpop.f32.mrf.mxu0
  %14877 = vdwg.mxu0
  %14878 = vmatprep.subr.bf16.mxu0 0
  %14879 = vmatpush1.bf16.msra.mxu0 %v10597
  %14880 = vmatprep.subr.bf16.mxu0 0
  %14881 = vmatpush1.bf16.msra.mxu0 %v10596
  %14882 = vmatprep.subr.bf16.mxu0 0
  %14883 = vmatpush1.bf16.msra.mxu0 %v10595
  %14884 = vmatprep.subr.bf16.mxu0 0
  %14885 = vmatpush1.bf16.msra.mxu0 %v10594
  %14886 = vmatprep.subr.bf16.mxu0 0
  %14887 = vmatpush1.bf16.msra.mxu0 %v10593
  %14888 = vmatprep.subr.bf16.mxu0 0
  %14889 = vmatpush1.bf16.msra.mxu0 %v10592
  %14890 = vmatprep.subr.bf16.mxu0 0
  %14891 = vmatpush1.bf16.msra.mxu0 %v10591
  %14892 = vmatprep.subr.bf16.mxu0 0
  %14893 = vmatpush1.bf16.msra.mxu0 %v10590
  %14894 = vmatprep.subr.bf16.mxu0 0
  %14895 = vmatpush2.bf16.msra.mxu0 %v10605
  %14896 = vmatprep.subr.bf16.mxu0 0
  %14897 = vmatpush2.bf16.msra.mxu0 %v10604
  %14898 = vmatprep.subr.bf16.mxu0 0
  %14899 = vmatpush2.bf16.msra.mxu0 %v10603
  %14900 = vmatprep.subr.bf16.mxu0 0
  %14901 = vmatpush2.bf16.msra.mxu0 %v10602
  %14902 = vmatprep.subr.bf16.mxu0 0
  %14903 = vmatpush2.bf16.msra.mxu0 %v10601
  %14904 = vmatprep.subr.bf16.mxu0 0
  %14905 = vmatpush2.bf16.msra.mxu0 %v10600
  %14906 = vmatprep.subr.bf16.mxu0 0
  %14907 = vmatpush2.bf16.msra.mxu0 %v10599
  %14908 = vmatprep.subr.bf16.mxu0 0
  %14909 = vmatpush2.bf16.msra.mxu0 %v10598
  %14910 = vmatprep.mubr.bf16.mxu0 %v308
  %14911 = vmatmul.mubr.bf16.gmra.mxu0 %v307
  %v14912 = vpop.f32.mrf.mxu0
  %v14913 = vadd.f32 %v14873, %v14912
  %v14914 = vpop.f32.mrf.mxu0
  %v14915 = vpop.f32.mrf.mxu0
  %v14916 = vpop.f32.mrf.mxu0
  %14917 = vdwg.mxu0
  %14918 = vmatprep.subr.bf16.mxu0 0
  %14919 = vmatpush1.bf16.msra.mxu0 %v10613
  %14920 = vmatprep.subr.bf16.mxu0 0
  %14921 = vmatpush1.bf16.msra.mxu0 %v10612
  %14922 = vmatprep.subr.bf16.mxu0 0
  %14923 = vmatpush1.bf16.msra.mxu0 %v10611
  %14924 = vmatprep.subr.bf16.mxu0 0
  %14925 = vmatpush1.bf16.msra.mxu0 %v10610
  %14926 = vmatprep.subr.bf16.mxu0 0
  %14927 = vmatpush1.bf16.msra.mxu0 %v10609
  %14928 = vmatprep.subr.bf16.mxu0 0
  %14929 = vmatpush1.bf16.msra.mxu0 %v10608
  %14930 = vmatprep.subr.bf16.mxu0 0
  %14931 = vmatpush1.bf16.msra.mxu0 %v10607
  %14932 = vmatprep.subr.bf16.mxu0 0
  %14933 = vmatpush1.bf16.msra.mxu0 %v10606
  %14934 = vmatprep.subr.bf16.mxu0 0
  %14935 = vmatpush2.bf16.msra.mxu0 %v10621
  %14936 = vmatprep.subr.bf16.mxu0 0
  %14937 = vmatpush2.bf16.msra.mxu0 %v10620
  %14938 = vmatprep.subr.bf16.mxu0 0
  %14939 = vmatpush2.bf16.msra.mxu0 %v10619
  %14940 = vmatprep.subr.bf16.mxu0 0
  %14941 = vmatpush2.bf16.msra.mxu0 %v10618
  %14942 = vmatprep.subr.bf16.mxu0 0
  %14943 = vmatpush2.bf16.msra.mxu0 %v10617
  %14944 = vmatprep.subr.bf16.mxu0 0
  %14945 = vmatpush2.bf16.msra.mxu0 %v10616
  %14946 = vmatprep.subr.bf16.mxu0 0
  %14947 = vmatpush2.bf16.msra.mxu0 %v10615
  %14948 = vmatprep.subr.bf16.mxu0 0
  %14949 = vmatpush2.bf16.msra.mxu0 %v10614
  %14950 = vmatprep.mubr.bf16.mxu0 %v310
  %14951 = vmatmul.mubr.bf16.gmra.mxu0 %v309
  %v14952 = vpop.f32.mrf.mxu0
  %v14953 = vadd.f32 %v14913, %v14952
  %v14954 = vpop.f32.mrf.mxu0
  %v14955 = vpop.f32.mrf.mxu0
  %v14956 = vpop.f32.mrf.mxu0
  %14957 = vdwg.mxu0
  %14958 = vmatprep.subr.bf16.mxu0 0
  %14959 = vmatpush1.bf16.msra.mxu0 %v10629
  %14960 = vmatprep.subr.bf16.mxu0 0
  %14961 = vmatpush1.bf16.msra.mxu0 %v10628
  %14962 = vmatprep.subr.bf16.mxu0 0
  %14963 = vmatpush1.bf16.msra.mxu0 %v10627
  %14964 = vmatprep.subr.bf16.mxu0 0
  %14965 = vmatpush1.bf16.msra.mxu0 %v10626
  %14966 = vmatprep.subr.bf16.mxu0 0
  %14967 = vmatpush1.bf16.msra.mxu0 %v10625
  %14968 = vmatprep.subr.bf16.mxu0 0
  %14969 = vmatpush1.bf16.msra.mxu0 %v10624
  %14970 = vmatprep.subr.bf16.mxu0 0
  %14971 = vmatpush1.bf16.msra.mxu0 %v10623
  %14972 = vmatprep.subr.bf16.mxu0 0
  %14973 = vmatpush1.bf16.msra.mxu0 %v10622
  %14974 = vmatprep.subr.bf16.mxu0 0
  %14975 = vmatpush2.bf16.msra.mxu0 %v10637
  %14976 = vmatprep.subr.bf16.mxu0 0
  %14977 = vmatpush2.bf16.msra.mxu0 %v10636
  %14978 = vmatprep.subr.bf16.mxu0 0
  %14979 = vmatpush2.bf16.msra.mxu0 %v10635
  %14980 = vmatprep.subr.bf16.mxu0 0
  %14981 = vmatpush2.bf16.msra.mxu0 %v10634
  %14982 = vmatprep.subr.bf16.mxu0 0
  %14983 = vmatpush2.bf16.msra.mxu0 %v10633
  %14984 = vmatprep.subr.bf16.mxu0 0
  %14985 = vmatpush2.bf16.msra.mxu0 %v10632
  %14986 = vmatprep.subr.bf16.mxu0 0
  %14987 = vmatpush2.bf16.msra.mxu0 %v10631
  %14988 = vmatprep.subr.bf16.mxu0 0
  %14989 = vmatpush2.bf16.msra.mxu0 %v10630
  %14990 = vmatprep.mubr.bf16.mxu0 %v312
  %14991 = vmatmul.mubr.bf16.gmra.mxu0 %v311
  %v14992 = vpop.f32.mrf.mxu0
  %v14993 = vadd.f32 %v14953, %v14992
  %v14994 = vpop.f32.mrf.mxu0
  %v14995 = vpop.f32.mrf.mxu0
  %v14996 = vpop.f32.mrf.mxu0
  %14997 = vdwg.mxu0
  %14998 = vmatprep.subr.bf16.mxu0 0
  %14999 = vmatpush1.bf16.msra.mxu0 %v10645
  %15000 = vmatprep.subr.bf16.mxu0 0
  %15001 = vmatpush1.bf16.msra.mxu0 %v10644
  %15002 = vmatprep.subr.bf16.mxu0 0
  %15003 = vmatpush1.bf16.msra.mxu0 %v10643
  %15004 = vmatprep.subr.bf16.mxu0 0
  %15005 = vmatpush1.bf16.msra.mxu0 %v10642
  %15006 = vmatprep.subr.bf16.mxu0 0
  %15007 = vmatpush1.bf16.msra.mxu0 %v10641
  %15008 = vmatprep.subr.bf16.mxu0 0
  %15009 = vmatpush1.bf16.msra.mxu0 %v10640
  %15010 = vmatprep.subr.bf16.mxu0 0
  %15011 = vmatpush1.bf16.msra.mxu0 %v10639
  %15012 = vmatprep.subr.bf16.mxu0 0
  %15013 = vmatpush1.bf16.msra.mxu0 %v10638
  %15014 = vmatprep.subr.bf16.mxu0 0
  %15015 = vmatpush2.bf16.msra.mxu0 %v10653
  %15016 = vmatprep.subr.bf16.mxu0 0
  %15017 = vmatpush2.bf16.msra.mxu0 %v10652
  %15018 = vmatprep.subr.bf16.mxu0 0
  %15019 = vmatpush2.bf16.msra.mxu0 %v10651
  %15020 = vmatprep.subr.bf16.mxu0 0
  %15021 = vmatpush2.bf16.msra.mxu0 %v10650
  %15022 = vmatprep.subr.bf16.mxu0 0
  %15023 = vmatpush2.bf16.msra.mxu0 %v10649
  %15024 = vmatprep.subr.bf16.mxu0 0
  %15025 = vmatpush2.bf16.msra.mxu0 %v10648
  %15026 = vmatprep.subr.bf16.mxu0 0
  %15027 = vmatpush2.bf16.msra.mxu0 %v10647
  %15028 = vmatprep.subr.bf16.mxu0 0
  %15029 = vmatpush2.bf16.msra.mxu0 %v10646
  %15030 = vmatprep.mubr.bf16.mxu0 %v314
  %15031 = vmatmul.mubr.bf16.gmra.mxu0 %v313
  %v15032 = vpop.f32.mrf.mxu0
  %v15033 = vadd.f32 %v14993, %v15032
  %v15034 = vpop.f32.mrf.mxu0
  %v15035 = vpop.f32.mrf.mxu0
  %v15036 = vpop.f32.mrf.mxu0
  %15037 = vdwg.mxu0
  %15038 = vmatprep.subr.bf16.mxu0 0
  %15039 = vmatpush1.bf16.msra.mxu0 %v10661
  %15040 = vmatprep.subr.bf16.mxu0 0
  %15041 = vmatpush1.bf16.msra.mxu0 %v10660
  %15042 = vmatprep.subr.bf16.mxu0 0
  %15043 = vmatpush1.bf16.msra.mxu0 %v10659
  %15044 = vmatprep.subr.bf16.mxu0 0
  %15045 = vmatpush1.bf16.msra.mxu0 %v10658
  %15046 = vmatprep.subr.bf16.mxu0 0
  %15047 = vmatpush1.bf16.msra.mxu0 %v10657
  %15048 = vmatprep.subr.bf16.mxu0 0
  %15049 = vmatpush1.bf16.msra.mxu0 %v10656
  %15050 = vmatprep.subr.bf16.mxu0 0
  %15051 = vmatpush1.bf16.msra.mxu0 %v10655
  %15052 = vmatprep.subr.bf16.mxu0 0
  %15053 = vmatpush1.bf16.msra.mxu0 %v10654
  %15054 = vmatprep.subr.bf16.mxu0 0
  %15055 = vmatpush2.bf16.msra.mxu0 %v10669
  %15056 = vmatprep.subr.bf16.mxu0 0
  %15057 = vmatpush2.bf16.msra.mxu0 %v10668
  %15058 = vmatprep.subr.bf16.mxu0 0
  %15059 = vmatpush2.bf16.msra.mxu0 %v10667
  %15060 = vmatprep.subr.bf16.mxu0 0
  %15061 = vmatpush2.bf16.msra.mxu0 %v10666
  %15062 = vmatprep.subr.bf16.mxu0 0
  %15063 = vmatpush2.bf16.msra.mxu0 %v10665
  %15064 = vmatprep.subr.bf16.mxu0 0
  %15065 = vmatpush2.bf16.msra.mxu0 %v10664
  %15066 = vmatprep.subr.bf16.mxu0 0
  %15067 = vmatpush2.bf16.msra.mxu0 %v10663
  %15068 = vmatprep.subr.bf16.mxu0 0
  %15069 = vmatpush2.bf16.msra.mxu0 %v10662
  %15070 = vmatprep.mubr.bf16.mxu0 %v316
  %15071 = vmatmul.mubr.bf16.gmra.mxu0 %v315
  %v15072 = vpop.f32.mrf.mxu0
  %v15073 = vadd.f32 %v15033, %v15072
  %v15074 = vpop.f32.mrf.mxu0
  %v15075 = vpop.f32.mrf.mxu0
  %v15076 = vpop.f32.mrf.mxu0
  %15077 = vdwg.mxu0
  %15078 = vmatprep.subr.bf16.mxu0 0
  %15079 = vmatpush1.bf16.msra.mxu0 %v10677
  %15080 = vmatprep.subr.bf16.mxu0 0
  %15081 = vmatpush1.bf16.msra.mxu0 %v10676
  %15082 = vmatprep.subr.bf16.mxu0 0
  %15083 = vmatpush1.bf16.msra.mxu0 %v10675
  %15084 = vmatprep.subr.bf16.mxu0 0
  %15085 = vmatpush1.bf16.msra.mxu0 %v10674
  %15086 = vmatprep.subr.bf16.mxu0 0
  %15087 = vmatpush1.bf16.msra.mxu0 %v10673
  %15088 = vmatprep.subr.bf16.mxu0 0
  %15089 = vmatpush1.bf16.msra.mxu0 %v10672
  %15090 = vmatprep.subr.bf16.mxu0 0
  %15091 = vmatpush1.bf16.msra.mxu0 %v10671
  %15092 = vmatprep.subr.bf16.mxu0 0
  %15093 = vmatpush1.bf16.msra.mxu0 %v10670
  %15094 = vmatprep.subr.bf16.mxu0 0
  %15095 = vmatpush2.bf16.msra.mxu0 %v10685
  %15096 = vmatprep.subr.bf16.mxu0 0
  %15097 = vmatpush2.bf16.msra.mxu0 %v10684
  %15098 = vmatprep.subr.bf16.mxu0 0
  %15099 = vmatpush2.bf16.msra.mxu0 %v10683
  %15100 = vmatprep.subr.bf16.mxu0 0
  %15101 = vmatpush2.bf16.msra.mxu0 %v10682
  %15102 = vmatprep.subr.bf16.mxu0 0
  %15103 = vmatpush2.bf16.msra.mxu0 %v10681
  %15104 = vmatprep.subr.bf16.mxu0 0
  %15105 = vmatpush2.bf16.msra.mxu0 %v10680
  %15106 = vmatprep.subr.bf16.mxu0 0
  %15107 = vmatpush2.bf16.msra.mxu0 %v10679
  %15108 = vmatprep.subr.bf16.mxu0 0
  %15109 = vmatpush2.bf16.msra.mxu0 %v10678
  %15110 = vmatprep.mubr.bf16.mxu0 %v318
  %15111 = vmatmul.mubr.bf16.gmra.mxu0 %v317
  %v15112 = vpop.f32.mrf.mxu0
  %v15113 = vadd.f32 %v15073, %v15112
  %v15114 = vpop.f32.mrf.mxu0
  %v15115 = vpop.f32.mrf.mxu0
  %v15116 = vpop.f32.mrf.mxu0
  %15117 = vdwg.mxu0
  %15118 = vmatprep.subr.bf16.mxu0 0
  %15119 = vmatpush1.bf16.msra.mxu0 %v10693
  %15120 = vmatprep.subr.bf16.mxu0 0
  %15121 = vmatpush1.bf16.msra.mxu0 %v10692
  %15122 = vmatprep.subr.bf16.mxu0 0
  %15123 = vmatpush1.bf16.msra.mxu0 %v10691
  %15124 = vmatprep.subr.bf16.mxu0 0
  %15125 = vmatpush1.bf16.msra.mxu0 %v10690
  %15126 = vmatprep.subr.bf16.mxu0 0
  %15127 = vmatpush1.bf16.msra.mxu0 %v10689
  %15128 = vmatprep.subr.bf16.mxu0 0
  %15129 = vmatpush1.bf16.msra.mxu0 %v10688
  %15130 = vmatprep.subr.bf16.mxu0 0
  %15131 = vmatpush1.bf16.msra.mxu0 %v10687
  %15132 = vmatprep.subr.bf16.mxu0 0
  %15133 = vmatpush1.bf16.msra.mxu0 %v10686
  %15134 = vmatprep.subr.bf16.mxu0 0
  %15135 = vmatpush2.bf16.msra.mxu0 %v10701
  %15136 = vmatprep.subr.bf16.mxu0 0
  %15137 = vmatpush2.bf16.msra.mxu0 %v10700
  %15138 = vmatprep.subr.bf16.mxu0 0
  %15139 = vmatpush2.bf16.msra.mxu0 %v10699
  %15140 = vmatprep.subr.bf16.mxu0 0
  %15141 = vmatpush2.bf16.msra.mxu0 %v10698
  %15142 = vmatprep.subr.bf16.mxu0 0
  %15143 = vmatpush2.bf16.msra.mxu0 %v10697
  %15144 = vmatprep.subr.bf16.mxu0 0
  %15145 = vmatpush2.bf16.msra.mxu0 %v10696
  %15146 = vmatprep.subr.bf16.mxu0 0
  %15147 = vmatpush2.bf16.msra.mxu0 %v10695
  %15148 = vmatprep.subr.bf16.mxu0 0
  %15149 = vmatpush2.bf16.msra.mxu0 %v10694
  %15150 = vmatprep.mubr.bf16.mxu0 %v320
  %15151 = vmatmul.mubr.bf16.gmra.mxu0 %v319
  %v15152 = vpop.f32.mrf.mxu0
  %v15153 = vadd.f32 %v15113, %v15152
  %v15154 = vpop.f32.mrf.mxu0
  %v15155 = vpop.f32.mrf.mxu0
  %v15156 = vpop.f32.mrf.mxu0
  %15157 = vdwg.mxu0
  %15158 = vmatprep.subr.bf16.mxu0 0
  %15159 = vmatpush1.bf16.msra.mxu0 %v10709
  %15160 = vmatprep.subr.bf16.mxu0 0
  %15161 = vmatpush1.bf16.msra.mxu0 %v10708
  %15162 = vmatprep.subr.bf16.mxu0 0
  %15163 = vmatpush1.bf16.msra.mxu0 %v10707
  %15164 = vmatprep.subr.bf16.mxu0 0
  %15165 = vmatpush1.bf16.msra.mxu0 %v10706
  %15166 = vmatprep.subr.bf16.mxu0 0
  %15167 = vmatpush1.bf16.msra.mxu0 %v10705
  %15168 = vmatprep.subr.bf16.mxu0 0
  %15169 = vmatpush1.bf16.msra.mxu0 %v10704
  %15170 = vmatprep.subr.bf16.mxu0 0
  %15171 = vmatpush1.bf16.msra.mxu0 %v10703
  %15172 = vmatprep.subr.bf16.mxu0 0
  %15173 = vmatpush1.bf16.msra.mxu0 %v10702
  %15174 = vmatprep.subr.bf16.mxu0 0
  %15175 = vmatpush2.bf16.msra.mxu0 %v10717
  %15176 = vmatprep.subr.bf16.mxu0 0
  %15177 = vmatpush2.bf16.msra.mxu0 %v10716
  %15178 = vmatprep.subr.bf16.mxu0 0
  %15179 = vmatpush2.bf16.msra.mxu0 %v10715
  %15180 = vmatprep.subr.bf16.mxu0 0
  %15181 = vmatpush2.bf16.msra.mxu0 %v10714
  %15182 = vmatprep.subr.bf16.mxu0 0
  %15183 = vmatpush2.bf16.msra.mxu0 %v10713
  %15184 = vmatprep.subr.bf16.mxu0 0
  %15185 = vmatpush2.bf16.msra.mxu0 %v10712
  %15186 = vmatprep.subr.bf16.mxu0 0
  %15187 = vmatpush2.bf16.msra.mxu0 %v10711
  %15188 = vmatprep.subr.bf16.mxu0 0
  %15189 = vmatpush2.bf16.msra.mxu0 %v10710
  %15190 = vmatprep.mubr.bf16.mxu0 %v322
  %15191 = vmatmul.mubr.bf16.gmra.mxu0 %v321
  %v15192 = vpop.f32.mrf.mxu0
  %v15193 = vadd.f32 %v15153, %v15192
  %v15194 = vpop.f32.mrf.mxu0
  %v15195 = vpop.f32.mrf.mxu0
  %v15196 = vpop.f32.mrf.mxu0
  %15197 = vdwg.mxu0
  %15198 = vmatprep.subr.bf16.mxu0 0
  %15199 = vmatpush1.bf16.msra.mxu0 %v10725
  %15200 = vmatprep.subr.bf16.mxu0 0
  %15201 = vmatpush1.bf16.msra.mxu0 %v10724
  %15202 = vmatprep.subr.bf16.mxu0 0
  %15203 = vmatpush1.bf16.msra.mxu0 %v10723
  %15204 = vmatprep.subr.bf16.mxu0 0
  %15205 = vmatpush1.bf16.msra.mxu0 %v10722
  %15206 = vmatprep.subr.bf16.mxu0 0
  %15207 = vmatpush1.bf16.msra.mxu0 %v10721
  %15208 = vmatprep.subr.bf16.mxu0 0
  %15209 = vmatpush1.bf16.msra.mxu0 %v10720
  %15210 = vmatprep.subr.bf16.mxu0 0
  %15211 = vmatpush1.bf16.msra.mxu0 %v10719
  %15212 = vmatprep.subr.bf16.mxu0 0
  %15213 = vmatpush1.bf16.msra.mxu0 %v10718
  %15214 = vmatprep.subr.bf16.mxu0 0
  %15215 = vmatpush2.bf16.msra.mxu0 %v10733
  %15216 = vmatprep.subr.bf16.mxu0 0
  %15217 = vmatpush2.bf16.msra.mxu0 %v10732
  %15218 = vmatprep.subr.bf16.mxu0 0
  %15219 = vmatpush2.bf16.msra.mxu0 %v10731
  %15220 = vmatprep.subr.bf16.mxu0 0
  %15221 = vmatpush2.bf16.msra.mxu0 %v10730
  %15222 = vmatprep.subr.bf16.mxu0 0
  %15223 = vmatpush2.bf16.msra.mxu0 %v10729
  %15224 = vmatprep.subr.bf16.mxu0 0
  %15225 = vmatpush2.bf16.msra.mxu0 %v10728
  %15226 = vmatprep.subr.bf16.mxu0 0
  %15227 = vmatpush2.bf16.msra.mxu0 %v10727
  %15228 = vmatprep.subr.bf16.mxu0 0
  %15229 = vmatpush2.bf16.msra.mxu0 %v10726
  %15230 = vmatprep.mubr.bf16.mxu0 %v324
  %15231 = vmatmul.mubr.bf16.gmra.mxu0 %v323
  %v15232 = vpop.f32.mrf.mxu0
  %v15233 = vadd.f32 %v15193, %v15232
  %v15234 = vpop.f32.mrf.mxu0
  %v15235 = vpop.f32.mrf.mxu0
  %v15236 = vpop.f32.mrf.mxu0
  %15237 = vdwg.mxu0
  %15238 = vmatprep.subr.bf16.mxu0 0
  %15239 = vmatpush1.bf16.msra.mxu0 %v10741
  %15240 = vmatprep.subr.bf16.mxu0 0
  %15241 = vmatpush1.bf16.msra.mxu0 %v10740
  %15242 = vmatprep.subr.bf16.mxu0 0
  %15243 = vmatpush1.bf16.msra.mxu0 %v10739
  %15244 = vmatprep.subr.bf16.mxu0 0
  %15245 = vmatpush1.bf16.msra.mxu0 %v10738
  %15246 = vmatprep.subr.bf16.mxu0 0
  %15247 = vmatpush1.bf16.msra.mxu0 %v10737
  %15248 = vmatprep.subr.bf16.mxu0 0
  %15249 = vmatpush1.bf16.msra.mxu0 %v10736
  %15250 = vmatprep.subr.bf16.mxu0 0
  %15251 = vmatpush1.bf16.msra.mxu0 %v10735
  %15252 = vmatprep.subr.bf16.mxu0 0
  %15253 = vmatpush1.bf16.msra.mxu0 %v10734
  %15254 = vmatprep.subr.bf16.mxu0 0
  %15255 = vmatpush2.bf16.msra.mxu0 %v10749
  %15256 = vmatprep.subr.bf16.mxu0 0
  %15257 = vmatpush2.bf16.msra.mxu0 %v10748
  %15258 = vmatprep.subr.bf16.mxu0 0
  %15259 = vmatpush2.bf16.msra.mxu0 %v10747
  %15260 = vmatprep.subr.bf16.mxu0 0
  %15261 = vmatpush2.bf16.msra.mxu0 %v10746
  %15262 = vmatprep.subr.bf16.mxu0 0
  %15263 = vmatpush2.bf16.msra.mxu0 %v10745
  %15264 = vmatprep.subr.bf16.mxu0 0
  %15265 = vmatpush2.bf16.msra.mxu0 %v10744
  %15266 = vmatprep.subr.bf16.mxu0 0
  %15267 = vmatpush2.bf16.msra.mxu0 %v10743
  %15268 = vmatprep.subr.bf16.mxu0 0
  %15269 = vmatpush2.bf16.msra.mxu0 %v10742
  %15270 = vmatprep.mubr.bf16.mxu0 %v326
  %15271 = vmatmul.mubr.bf16.gmra.mxu0 %v325
  %v15272 = vpop.f32.mrf.mxu0
  %v15273 = vadd.f32 %v15233, %v15272
  %v15274 = vpop.f32.mrf.mxu0
  %v15275 = vpop.f32.mrf.mxu0
  %v15276 = vpop.f32.mrf.mxu0
  %15277 = vdwg.mxu0
  %15278 = vmatprep.subr.bf16.mxu0 0
  %15279 = vmatpush1.bf16.msra.mxu0 %v10757
  %15280 = vmatprep.subr.bf16.mxu0 0
  %15281 = vmatpush1.bf16.msra.mxu0 %v10756
  %15282 = vmatprep.subr.bf16.mxu0 0
  %15283 = vmatpush1.bf16.msra.mxu0 %v10755
  %15284 = vmatprep.subr.bf16.mxu0 0
  %15285 = vmatpush1.bf16.msra.mxu0 %v10754
  %15286 = vmatprep.subr.bf16.mxu0 0
  %15287 = vmatpush1.bf16.msra.mxu0 %v10753
  %15288 = vmatprep.subr.bf16.mxu0 0
  %15289 = vmatpush1.bf16.msra.mxu0 %v10752
  %15290 = vmatprep.subr.bf16.mxu0 0
  %15291 = vmatpush1.bf16.msra.mxu0 %v10751
  %15292 = vmatprep.subr.bf16.mxu0 0
  %15293 = vmatpush1.bf16.msra.mxu0 %v10750
  %15294 = vmatprep.subr.bf16.mxu0 0
  %15295 = vmatpush2.bf16.msra.mxu0 %v10765
  %15296 = vmatprep.subr.bf16.mxu0 0
  %15297 = vmatpush2.bf16.msra.mxu0 %v10764
  %15298 = vmatprep.subr.bf16.mxu0 0
  %15299 = vmatpush2.bf16.msra.mxu0 %v10763
  %15300 = vmatprep.subr.bf16.mxu0 0
  %15301 = vmatpush2.bf16.msra.mxu0 %v10762
  %15302 = vmatprep.subr.bf16.mxu0 0
  %15303 = vmatpush2.bf16.msra.mxu0 %v10761
  %15304 = vmatprep.subr.bf16.mxu0 0
  %15305 = vmatpush2.bf16.msra.mxu0 %v10760
  %15306 = vmatprep.subr.bf16.mxu0 0
  %15307 = vmatpush2.bf16.msra.mxu0 %v10759
  %15308 = vmatprep.subr.bf16.mxu0 0
  %15309 = vmatpush2.bf16.msra.mxu0 %v10758
  %15310 = vmatprep.mubr.bf16.mxu0 %v328
  %15311 = vmatmul.mubr.bf16.gmra.mxu0 %v327
  %v15312 = vpop.f32.mrf.mxu0
  %v15313 = vadd.f32 %v15273, %v15312
  %v15314 = vpop.f32.mrf.mxu0
  %v15315 = vpop.f32.mrf.mxu0
  %v15316 = vpop.f32.mrf.mxu0
  %15317 = vdwg.mxu0
  %15318 = vmatprep.subr.bf16.mxu0 0
  %15319 = vmatpush1.bf16.msra.mxu0 %v10773
  %15320 = vmatprep.subr.bf16.mxu0 0
  %15321 = vmatpush1.bf16.msra.mxu0 %v10772
  %15322 = vmatprep.subr.bf16.mxu0 0
  %15323 = vmatpush1.bf16.msra.mxu0 %v10771
  %15324 = vmatprep.subr.bf16.mxu0 0
  %15325 = vmatpush1.bf16.msra.mxu0 %v10770
  %15326 = vmatprep.subr.bf16.mxu0 0
  %15327 = vmatpush1.bf16.msra.mxu0 %v10769
  %15328 = vmatprep.subr.bf16.mxu0 0
  %15329 = vmatpush1.bf16.msra.mxu0 %v10768
  %15330 = vmatprep.subr.bf16.mxu0 0
  %15331 = vmatpush1.bf16.msra.mxu0 %v10767
  %15332 = vmatprep.subr.bf16.mxu0 0
  %15333 = vmatpush1.bf16.msra.mxu0 %v10766
  %15334 = vmatprep.subr.bf16.mxu0 0
  %15335 = vmatpush2.bf16.msra.mxu0 %v10781
  %15336 = vmatprep.subr.bf16.mxu0 0
  %15337 = vmatpush2.bf16.msra.mxu0 %v10780
  %15338 = vmatprep.subr.bf16.mxu0 0
  %15339 = vmatpush2.bf16.msra.mxu0 %v10779
  %15340 = vmatprep.subr.bf16.mxu0 0
  %15341 = vmatpush2.bf16.msra.mxu0 %v10778
  %15342 = vmatprep.subr.bf16.mxu0 0
  %15343 = vmatpush2.bf16.msra.mxu0 %v10777
  %15344 = vmatprep.subr.bf16.mxu0 0
  %15345 = vmatpush2.bf16.msra.mxu0 %v10776
  %15346 = vmatprep.subr.bf16.mxu0 0
  %15347 = vmatpush2.bf16.msra.mxu0 %v10775
  %15348 = vmatprep.subr.bf16.mxu0 0
  %15349 = vmatpush2.bf16.msra.mxu0 %v10774
  %15350 = vmatprep.mubr.bf16.mxu0 %v330
  %15351 = vmatmul.mubr.bf16.gmra.mxu0 %v329
  %v15352 = vpop.f32.mrf.mxu0
  %v15353 = vadd.f32 %v15313, %v15352
  %v15354 = vpop.f32.mrf.mxu0
  %v15355 = vpop.f32.mrf.mxu0
  %v15356 = vpop.f32.mrf.mxu0
  %15357 = vdwg.mxu0
  %15358 = vmatprep.subr.bf16.mxu0 0
  %15359 = vmatpush1.bf16.msra.mxu0 %v10789
  %15360 = vmatprep.subr.bf16.mxu0 0
  %15361 = vmatpush1.bf16.msra.mxu0 %v10788
  %15362 = vmatprep.subr.bf16.mxu0 0
  %15363 = vmatpush1.bf16.msra.mxu0 %v10787
  %15364 = vmatprep.subr.bf16.mxu0 0
  %15365 = vmatpush1.bf16.msra.mxu0 %v10786
  %15366 = vmatprep.subr.bf16.mxu0 0
  %15367 = vmatpush1.bf16.msra.mxu0 %v10785
  %15368 = vmatprep.subr.bf16.mxu0 0
  %15369 = vmatpush1.bf16.msra.mxu0 %v10784
  %15370 = vmatprep.subr.bf16.mxu0 0
  %15371 = vmatpush1.bf16.msra.mxu0 %v10783
  %15372 = vmatprep.subr.bf16.mxu0 0
  %15373 = vmatpush1.bf16.msra.mxu0 %v10782
  %15374 = vmatprep.subr.bf16.mxu0 0
  %15375 = vmatpush2.bf16.msra.mxu0 %v10797
  %15376 = vmatprep.subr.bf16.mxu0 0
  %15377 = vmatpush2.bf16.msra.mxu0 %v10796
  %15378 = vmatprep.subr.bf16.mxu0 0
  %15379 = vmatpush2.bf16.msra.mxu0 %v10795
  %15380 = vmatprep.subr.bf16.mxu0 0
  %15381 = vmatpush2.bf16.msra.mxu0 %v10794
  %15382 = vmatprep.subr.bf16.mxu0 0
  %15383 = vmatpush2.bf16.msra.mxu0 %v10793
  %15384 = vmatprep.subr.bf16.mxu0 0
  %15385 = vmatpush2.bf16.msra.mxu0 %v10792
  %15386 = vmatprep.subr.bf16.mxu0 0
  %15387 = vmatpush2.bf16.msra.mxu0 %v10791
  %15388 = vmatprep.subr.bf16.mxu0 0
  %15389 = vmatpush2.bf16.msra.mxu0 %v10790
  %15390 = vmatprep.mubr.bf16.mxu0 %v332
  %15391 = vmatmul.mubr.bf16.gmra.mxu0 %v331
  %v15392 = vpop.f32.mrf.mxu0
  %v15393 = vadd.f32 %v15353, %v15392
  %v15394 = vpop.f32.mrf.mxu0
  %v15395 = vpop.f32.mrf.mxu0
  %v15396 = vpop.f32.mrf.mxu0
  %15397 = vdwg.mxu0
  %15398 = vmatprep.subr.bf16.mxu0 0
  %15399 = vmatpush1.bf16.msra.mxu0 %v10805
  %15400 = vmatprep.subr.bf16.mxu0 0
  %15401 = vmatpush1.bf16.msra.mxu0 %v10804
  %15402 = vmatprep.subr.bf16.mxu0 0
  %15403 = vmatpush1.bf16.msra.mxu0 %v10803
  %15404 = vmatprep.subr.bf16.mxu0 0
  %15405 = vmatpush1.bf16.msra.mxu0 %v10802
  %15406 = vmatprep.subr.bf16.mxu0 0
  %15407 = vmatpush1.bf16.msra.mxu0 %v10801
  %15408 = vmatprep.subr.bf16.mxu0 0
  %15409 = vmatpush1.bf16.msra.mxu0 %v10800
  %15410 = vmatprep.subr.bf16.mxu0 0
  %15411 = vmatpush1.bf16.msra.mxu0 %v10799
  %15412 = vmatprep.subr.bf16.mxu0 0
  %15413 = vmatpush1.bf16.msra.mxu0 %v10798
  %15414 = vmatprep.subr.bf16.mxu0 0
  %15415 = vmatpush2.bf16.msra.mxu0 %v10813
  %15416 = vmatprep.subr.bf16.mxu0 0
  %15417 = vmatpush2.bf16.msra.mxu0 %v10812
  %15418 = vmatprep.subr.bf16.mxu0 0
  %15419 = vmatpush2.bf16.msra.mxu0 %v10811
  %15420 = vmatprep.subr.bf16.mxu0 0
  %15421 = vmatpush2.bf16.msra.mxu0 %v10810
  %15422 = vmatprep.subr.bf16.mxu0 0
  %15423 = vmatpush2.bf16.msra.mxu0 %v10809
  %15424 = vmatprep.subr.bf16.mxu0 0
  %15425 = vmatpush2.bf16.msra.mxu0 %v10808
  %15426 = vmatprep.subr.bf16.mxu0 0
  %15427 = vmatpush2.bf16.msra.mxu0 %v10807
  %15428 = vmatprep.subr.bf16.mxu0 0
  %15429 = vmatpush2.bf16.msra.mxu0 %v10806
  %15430 = vmatprep.mubr.bf16.mxu0 %v334
  %15431 = vmatmul.mubr.bf16.gmra.mxu0 %v333
  %v15432 = vpop.f32.mrf.mxu0
  %v15433 = vadd.f32 %v15393, %v15432
  %v15434 = vpop.f32.mrf.mxu0
  %v15435 = vpop.f32.mrf.mxu0
  %v15436 = vpop.f32.mrf.mxu0
  %15437 = vdwg.mxu0
  %15438 = vmatprep.subr.bf16.mxu0 0
  %15439 = vmatpush1.bf16.msra.mxu0 %v10821
  %15440 = vmatprep.subr.bf16.mxu0 0
  %15441 = vmatpush1.bf16.msra.mxu0 %v10820
  %15442 = vmatprep.subr.bf16.mxu0 0
  %15443 = vmatpush1.bf16.msra.mxu0 %v10819
  %15444 = vmatprep.subr.bf16.mxu0 0
  %15445 = vmatpush1.bf16.msra.mxu0 %v10818
  %15446 = vmatprep.subr.bf16.mxu0 0
  %15447 = vmatpush1.bf16.msra.mxu0 %v10817
  %15448 = vmatprep.subr.bf16.mxu0 0
  %15449 = vmatpush1.bf16.msra.mxu0 %v10816
  %15450 = vmatprep.subr.bf16.mxu0 0
  %15451 = vmatpush1.bf16.msra.mxu0 %v10815
  %15452 = vmatprep.subr.bf16.mxu0 0
  %15453 = vmatpush1.bf16.msra.mxu0 %v10814
  %15454 = vmatprep.subr.bf16.mxu0 0
  %15455 = vmatpush2.bf16.msra.mxu0 %v10829
  %15456 = vmatprep.subr.bf16.mxu0 0
  %15457 = vmatpush2.bf16.msra.mxu0 %v10828
  %15458 = vmatprep.subr.bf16.mxu0 0
  %15459 = vmatpush2.bf16.msra.mxu0 %v10827
  %15460 = vmatprep.subr.bf16.mxu0 0
  %15461 = vmatpush2.bf16.msra.mxu0 %v10826
  %15462 = vmatprep.subr.bf16.mxu0 0
  %15463 = vmatpush2.bf16.msra.mxu0 %v10825
  %15464 = vmatprep.subr.bf16.mxu0 0
  %15465 = vmatpush2.bf16.msra.mxu0 %v10824
  %15466 = vmatprep.subr.bf16.mxu0 0
  %15467 = vmatpush2.bf16.msra.mxu0 %v10823
  %15468 = vmatprep.subr.bf16.mxu0 0
  %15469 = vmatpush2.bf16.msra.mxu0 %v10822
  %15470 = vmatprep.mubr.bf16.mxu0 %v336
  %15471 = vmatmul.mubr.bf16.gmra.mxu0 %v335
  %v15472 = vpop.f32.mrf.mxu0
  %v15473 = vadd.f32 %v15433, %v15472
  %v15474 = vpop.f32.mrf.mxu0
  %v15475 = vpop.f32.mrf.mxu0
  %v15476 = vpop.f32.mrf.mxu0
  %15477 = vdwg.mxu0
  %15478 = vmatprep.subr.bf16.mxu0 0
  %15479 = vmatpush1.bf16.msra.mxu0 %v10837
  %15480 = vmatprep.subr.bf16.mxu0 0
  %15481 = vmatpush1.bf16.msra.mxu0 %v10836
  %15482 = vmatprep.subr.bf16.mxu0 0
  %15483 = vmatpush1.bf16.msra.mxu0 %v10835
  %15484 = vmatprep.subr.bf16.mxu0 0
  %15485 = vmatpush1.bf16.msra.mxu0 %v10834
  %15486 = vmatprep.subr.bf16.mxu0 0
  %15487 = vmatpush1.bf16.msra.mxu0 %v10833
  %15488 = vmatprep.subr.bf16.mxu0 0
  %15489 = vmatpush1.bf16.msra.mxu0 %v10832
  %15490 = vmatprep.subr.bf16.mxu0 0
  %15491 = vmatpush1.bf16.msra.mxu0 %v10831
  %15492 = vmatprep.subr.bf16.mxu0 0
  %15493 = vmatpush1.bf16.msra.mxu0 %v10830
  %15494 = vmatprep.subr.bf16.mxu0 0
  %15495 = vmatpush2.bf16.msra.mxu0 %v10845
  %15496 = vmatprep.subr.bf16.mxu0 0
  %15497 = vmatpush2.bf16.msra.mxu0 %v10844
  %15498 = vmatprep.subr.bf16.mxu0 0
  %15499 = vmatpush2.bf16.msra.mxu0 %v10843
  %15500 = vmatprep.subr.bf16.mxu0 0
  %15501 = vmatpush2.bf16.msra.mxu0 %v10842
  %15502 = vmatprep.subr.bf16.mxu0 0
  %15503 = vmatpush2.bf16.msra.mxu0 %v10841
  %15504 = vmatprep.subr.bf16.mxu0 0
  %15505 = vmatpush2.bf16.msra.mxu0 %v10840
  %15506 = vmatprep.subr.bf16.mxu0 0
  %15507 = vmatpush2.bf16.msra.mxu0 %v10839
  %15508 = vmatprep.subr.bf16.mxu0 0
  %15509 = vmatpush2.bf16.msra.mxu0 %v10838
  %15510 = vmatprep.mubr.bf16.mxu0 %v338
  %15511 = vmatmul.mubr.bf16.gmra.mxu0 %v337
  %v15512 = vpop.f32.mrf.mxu0
  %v15513 = vadd.f32 %v15473, %v15512
  %v15514 = vpop.f32.mrf.mxu0
  %v15515 = vpop.f32.mrf.mxu0
  %v15516 = vpop.f32.mrf.mxu0
  %15517 = vdwg.mxu0
  %15518 = vmatprep.subr.bf16.mxu0 0
  %15519 = vmatpush1.bf16.msra.mxu0 %v10853
  %15520 = vmatprep.subr.bf16.mxu0 0
  %15521 = vmatpush1.bf16.msra.mxu0 %v10852
  %15522 = vmatprep.subr.bf16.mxu0 0
  %15523 = vmatpush1.bf16.msra.mxu0 %v10851
  %15524 = vmatprep.subr.bf16.mxu0 0
  %15525 = vmatpush1.bf16.msra.mxu0 %v10850
  %15526 = vmatprep.subr.bf16.mxu0 0
  %15527 = vmatpush1.bf16.msra.mxu0 %v10849
  %15528 = vmatprep.subr.bf16.mxu0 0
  %15529 = vmatpush1.bf16.msra.mxu0 %v10848
  %15530 = vmatprep.subr.bf16.mxu0 0
  %15531 = vmatpush1.bf16.msra.mxu0 %v10847
  %15532 = vmatprep.subr.bf16.mxu0 0
  %15533 = vmatpush1.bf16.msra.mxu0 %v10846
  %15534 = vmatprep.subr.bf16.mxu0 0
  %15535 = vmatpush2.bf16.msra.mxu0 %v10861
  %15536 = vmatprep.subr.bf16.mxu0 0
  %15537 = vmatpush2.bf16.msra.mxu0 %v10860
  %15538 = vmatprep.subr.bf16.mxu0 0
  %15539 = vmatpush2.bf16.msra.mxu0 %v10859
  %15540 = vmatprep.subr.bf16.mxu0 0
  %15541 = vmatpush2.bf16.msra.mxu0 %v10858
  %15542 = vmatprep.subr.bf16.mxu0 0
  %15543 = vmatpush2.bf16.msra.mxu0 %v10857
  %15544 = vmatprep.subr.bf16.mxu0 0
  %15545 = vmatpush2.bf16.msra.mxu0 %v10856
  %15546 = vmatprep.subr.bf16.mxu0 0
  %15547 = vmatpush2.bf16.msra.mxu0 %v10855
  %15548 = vmatprep.subr.bf16.mxu0 0
  %15549 = vmatpush2.bf16.msra.mxu0 %v10854
  %15550 = vmatprep.mubr.bf16.mxu0 %v340
  %15551 = vmatmul.mubr.bf16.gmra.mxu0 %v339
  %v15552 = vpop.f32.mrf.mxu0
  %v15553 = vadd.f32 %v15513, %v15552
  %v15554 = vpop.f32.mrf.mxu0
  %v15555 = vpop.f32.mrf.mxu0
  %v15556 = vpop.f32.mrf.mxu0
  %15557 = vdwg.mxu0
  %15558 = vmatprep.subr.bf16.mxu0 0
  %15559 = vmatpush1.bf16.msra.mxu0 %v10869
  %15560 = vmatprep.subr.bf16.mxu0 0
  %15561 = vmatpush1.bf16.msra.mxu0 %v10868
  %15562 = vmatprep.subr.bf16.mxu0 0
  %15563 = vmatpush1.bf16.msra.mxu0 %v10867
  %15564 = vmatprep.subr.bf16.mxu0 0
  %15565 = vmatpush1.bf16.msra.mxu0 %v10866
  %15566 = vmatprep.subr.bf16.mxu0 0
  %15567 = vmatpush1.bf16.msra.mxu0 %v10865
  %15568 = vmatprep.subr.bf16.mxu0 0
  %15569 = vmatpush1.bf16.msra.mxu0 %v10864
  %15570 = vmatprep.subr.bf16.mxu0 0
  %15571 = vmatpush1.bf16.msra.mxu0 %v10863
  %15572 = vmatprep.subr.bf16.mxu0 0
  %15573 = vmatpush1.bf16.msra.mxu0 %v10862
  %15574 = vmatprep.subr.bf16.mxu0 0
  %15575 = vmatpush2.bf16.msra.mxu0 %v10877
  %15576 = vmatprep.subr.bf16.mxu0 0
  %15577 = vmatpush2.bf16.msra.mxu0 %v10876
  %15578 = vmatprep.subr.bf16.mxu0 0
  %15579 = vmatpush2.bf16.msra.mxu0 %v10875
  %15580 = vmatprep.subr.bf16.mxu0 0
  %15581 = vmatpush2.bf16.msra.mxu0 %v10874
  %15582 = vmatprep.subr.bf16.mxu0 0
  %15583 = vmatpush2.bf16.msra.mxu0 %v10873
  %15584 = vmatprep.subr.bf16.mxu0 0
  %15585 = vmatpush2.bf16.msra.mxu0 %v10872
  %15586 = vmatprep.subr.bf16.mxu0 0
  %15587 = vmatpush2.bf16.msra.mxu0 %v10871
  %15588 = vmatprep.subr.bf16.mxu0 0
  %15589 = vmatpush2.bf16.msra.mxu0 %v10870
  %15590 = vmatprep.mubr.bf16.mxu0 %v342
  %15591 = vmatmul.mubr.bf16.gmra.mxu0 %v341
  %v15592 = vpop.f32.mrf.mxu0
  %v15593 = vadd.f32 %v15553, %v15592
  %v15594 = vpop.f32.mrf.mxu0
  %v15595 = vpop.f32.mrf.mxu0
  %v15596 = vpop.f32.mrf.mxu0
  %15597 = vdwg.mxu0
  %15598 = vmatprep.subr.bf16.mxu0 0
  %15599 = vmatpush1.bf16.msra.mxu0 %v10885
  %15600 = vmatprep.subr.bf16.mxu0 0
  %15601 = vmatpush1.bf16.msra.mxu0 %v10884
  %15602 = vmatprep.subr.bf16.mxu0 0
  %15603 = vmatpush1.bf16.msra.mxu0 %v10883
  %15604 = vmatprep.subr.bf16.mxu0 0
  %15605 = vmatpush1.bf16.msra.mxu0 %v10882
  %15606 = vmatprep.subr.bf16.mxu0 0
  %15607 = vmatpush1.bf16.msra.mxu0 %v10881
  %15608 = vmatprep.subr.bf16.mxu0 0
  %15609 = vmatpush1.bf16.msra.mxu0 %v10880
  %15610 = vmatprep.subr.bf16.mxu0 0
  %15611 = vmatpush1.bf16.msra.mxu0 %v10879
  %15612 = vmatprep.subr.bf16.mxu0 0
  %15613 = vmatpush1.bf16.msra.mxu0 %v10878
  %15614 = vmatprep.subr.bf16.mxu0 0
  %15615 = vmatpush2.bf16.msra.mxu0 %v10893
  %15616 = vmatprep.subr.bf16.mxu0 0
  %15617 = vmatpush2.bf16.msra.mxu0 %v10892
  %15618 = vmatprep.subr.bf16.mxu0 0
  %15619 = vmatpush2.bf16.msra.mxu0 %v10891
  %15620 = vmatprep.subr.bf16.mxu0 0
  %15621 = vmatpush2.bf16.msra.mxu0 %v10890
  %15622 = vmatprep.subr.bf16.mxu0 0
  %15623 = vmatpush2.bf16.msra.mxu0 %v10889
  %15624 = vmatprep.subr.bf16.mxu0 0
  %15625 = vmatpush2.bf16.msra.mxu0 %v10888
  %15626 = vmatprep.subr.bf16.mxu0 0
  %15627 = vmatpush2.bf16.msra.mxu0 %v10887
  %15628 = vmatprep.subr.bf16.mxu0 0
  %15629 = vmatpush2.bf16.msra.mxu0 %v10886
  %15630 = vmatprep.mubr.bf16.mxu0 %v344
  %15631 = vmatmul.mubr.bf16.gmra.mxu0 %v343
  %v15632 = vpop.f32.mrf.mxu0
  %v15633 = vadd.f32 %v15593, %v15632
  %v15634 = vpop.f32.mrf.mxu0
  %v15635 = vpop.f32.mrf.mxu0
  %v15636 = vpop.f32.mrf.mxu0
  %15637 = vdwg.mxu0
  %15638 = vmatprep.subr.bf16.mxu0 0
  %15639 = vmatpush1.bf16.msra.mxu0 %v10901
  %15640 = vmatprep.subr.bf16.mxu0 0
  %15641 = vmatpush1.bf16.msra.mxu0 %v10900
  %15642 = vmatprep.subr.bf16.mxu0 0
  %15643 = vmatpush1.bf16.msra.mxu0 %v10899
  %15644 = vmatprep.subr.bf16.mxu0 0
  %15645 = vmatpush1.bf16.msra.mxu0 %v10898
  %15646 = vmatprep.subr.bf16.mxu0 0
  %15647 = vmatpush1.bf16.msra.mxu0 %v10897
  %15648 = vmatprep.subr.bf16.mxu0 0
  %15649 = vmatpush1.bf16.msra.mxu0 %v10896
  %15650 = vmatprep.subr.bf16.mxu0 0
  %15651 = vmatpush1.bf16.msra.mxu0 %v10895
  %15652 = vmatprep.subr.bf16.mxu0 0
  %15653 = vmatpush1.bf16.msra.mxu0 %v10894
  %15654 = vmatprep.subr.bf16.mxu0 0
  %15655 = vmatpush2.bf16.msra.mxu0 %v10909
  %15656 = vmatprep.subr.bf16.mxu0 0
  %15657 = vmatpush2.bf16.msra.mxu0 %v10908
  %15658 = vmatprep.subr.bf16.mxu0 0
  %15659 = vmatpush2.bf16.msra.mxu0 %v10907
  %15660 = vmatprep.subr.bf16.mxu0 0
  %15661 = vmatpush2.bf16.msra.mxu0 %v10906
  %15662 = vmatprep.subr.bf16.mxu0 0
  %15663 = vmatpush2.bf16.msra.mxu0 %v10905
  %15664 = vmatprep.subr.bf16.mxu0 0
  %15665 = vmatpush2.bf16.msra.mxu0 %v10904
  %15666 = vmatprep.subr.bf16.mxu0 0
  %15667 = vmatpush2.bf16.msra.mxu0 %v10903
  %15668 = vmatprep.subr.bf16.mxu0 0
  %15669 = vmatpush2.bf16.msra.mxu0 %v10902
  %15670 = vmatprep.mubr.bf16.mxu0 %v346
  %15671 = vmatmul.mubr.bf16.gmra.mxu0 %v345
  %v15672 = vpop.f32.mrf.mxu0
  %v15673 = vadd.f32 %v15633, %v15672
  %v15674 = vpop.f32.mrf.mxu0
  %v15675 = vpop.f32.mrf.mxu0
  %v15676 = vpop.f32.mrf.mxu0
  %15677 = vdwg.mxu0
  %15678 = vmatprep.subr.bf16.mxu0 0
  %15679 = vmatpush1.bf16.msra.mxu0 %v10917
  %15680 = vmatprep.subr.bf16.mxu0 0
  %15681 = vmatpush1.bf16.msra.mxu0 %v10916
  %15682 = vmatprep.subr.bf16.mxu0 0
  %15683 = vmatpush1.bf16.msra.mxu0 %v10915
  %15684 = vmatprep.subr.bf16.mxu0 0
  %15685 = vmatpush1.bf16.msra.mxu0 %v10914
  %15686 = vmatprep.subr.bf16.mxu0 0
  %15687 = vmatpush1.bf16.msra.mxu0 %v10913
  %15688 = vmatprep.subr.bf16.mxu0 0
  %15689 = vmatpush1.bf16.msra.mxu0 %v10912
  %15690 = vmatprep.subr.bf16.mxu0 0
  %15691 = vmatpush1.bf16.msra.mxu0 %v10911
  %15692 = vmatprep.subr.bf16.mxu0 0
  %15693 = vmatpush1.bf16.msra.mxu0 %v10910
  %15694 = vmatprep.subr.bf16.mxu0 0
  %15695 = vmatpush2.bf16.msra.mxu0 %v10925
  %15696 = vmatprep.subr.bf16.mxu0 0
  %15697 = vmatpush2.bf16.msra.mxu0 %v10924
  %15698 = vmatprep.subr.bf16.mxu0 0
  %15699 = vmatpush2.bf16.msra.mxu0 %v10923
  %15700 = vmatprep.subr.bf16.mxu0 0
  %15701 = vmatpush2.bf16.msra.mxu0 %v10922
  %15702 = vmatprep.subr.bf16.mxu0 0
  %15703 = vmatpush2.bf16.msra.mxu0 %v10921
  %15704 = vmatprep.subr.bf16.mxu0 0
  %15705 = vmatpush2.bf16.msra.mxu0 %v10920
  %15706 = vmatprep.subr.bf16.mxu0 0
  %15707 = vmatpush2.bf16.msra.mxu0 %v10919
  %15708 = vmatprep.subr.bf16.mxu0 0
  %15709 = vmatpush2.bf16.msra.mxu0 %v10918
  %15710 = vmatprep.mubr.bf16.mxu0 %v348
  %15711 = vmatmul.mubr.bf16.gmra.mxu0 %v347
  %v15712 = vpop.f32.mrf.mxu0
  %v15713 = vadd.f32 %v15673, %v15712
  %v15714 = vpop.f32.mrf.mxu0
  %v15715 = vpop.f32.mrf.mxu0
  %v15716 = vpop.f32.mrf.mxu0
  %15717 = vdwg.mxu0
  %15718 = vmatprep.subr.bf16.mxu0 0
  %15719 = vmatpush1.bf16.msra.mxu0 %v10933
  %15720 = vmatprep.subr.bf16.mxu0 0
  %15721 = vmatpush1.bf16.msra.mxu0 %v10932
  %15722 = vmatprep.subr.bf16.mxu0 0
  %15723 = vmatpush1.bf16.msra.mxu0 %v10931
  %15724 = vmatprep.subr.bf16.mxu0 0
  %15725 = vmatpush1.bf16.msra.mxu0 %v10930
  %15726 = vmatprep.subr.bf16.mxu0 0
  %15727 = vmatpush1.bf16.msra.mxu0 %v10929
  %15728 = vmatprep.subr.bf16.mxu0 0
  %15729 = vmatpush1.bf16.msra.mxu0 %v10928
  %15730 = vmatprep.subr.bf16.mxu0 0
  %15731 = vmatpush1.bf16.msra.mxu0 %v10927
  %15732 = vmatprep.subr.bf16.mxu0 0
  %15733 = vmatpush1.bf16.msra.mxu0 %v10926
  %15734 = vmatprep.subr.bf16.mxu0 0
  %15735 = vmatpush2.bf16.msra.mxu0 %v10941
  %15736 = vmatprep.subr.bf16.mxu0 0
  %15737 = vmatpush2.bf16.msra.mxu0 %v10940
  %15738 = vmatprep.subr.bf16.mxu0 0
  %15739 = vmatpush2.bf16.msra.mxu0 %v10939
  %15740 = vmatprep.subr.bf16.mxu0 0
  %15741 = vmatpush2.bf16.msra.mxu0 %v10938
  %15742 = vmatprep.subr.bf16.mxu0 0
  %15743 = vmatpush2.bf16.msra.mxu0 %v10937
  %15744 = vmatprep.subr.bf16.mxu0 0
  %15745 = vmatpush2.bf16.msra.mxu0 %v10936
  %15746 = vmatprep.subr.bf16.mxu0 0
  %15747 = vmatpush2.bf16.msra.mxu0 %v10935
  %15748 = vmatprep.subr.bf16.mxu0 0
  %15749 = vmatpush2.bf16.msra.mxu0 %v10934
  %15750 = vmatprep.mubr.bf16.mxu0 %v350
  %15751 = vmatmul.mubr.bf16.gmra.mxu0 %v349
  %v15752 = vpop.f32.mrf.mxu0
  %v15753 = vadd.f32 %v15713, %v15752
  %v15754 = vpop.f32.mrf.mxu0
  %v15755 = vpop.f32.mrf.mxu0
  %v15756 = vpop.f32.mrf.mxu0
  %15757 = vdwg.mxu0
  %15758 = vmatprep.subr.bf16.mxu0 0
  %15759 = vmatpush1.bf16.msra.mxu0 %v10949
  %15760 = vmatprep.subr.bf16.mxu0 0
  %15761 = vmatpush1.bf16.msra.mxu0 %v10948
  %15762 = vmatprep.subr.bf16.mxu0 0
  %15763 = vmatpush1.bf16.msra.mxu0 %v10947
  %15764 = vmatprep.subr.bf16.mxu0 0
  %15765 = vmatpush1.bf16.msra.mxu0 %v10946
  %15766 = vmatprep.subr.bf16.mxu0 0
  %15767 = vmatpush1.bf16.msra.mxu0 %v10945
  %15768 = vmatprep.subr.bf16.mxu0 0
  %15769 = vmatpush1.bf16.msra.mxu0 %v10944
  %15770 = vmatprep.subr.bf16.mxu0 0
  %15771 = vmatpush1.bf16.msra.mxu0 %v10943
  %15772 = vmatprep.subr.bf16.mxu0 0
  %15773 = vmatpush1.bf16.msra.mxu0 %v10942
  %15774 = vmatprep.subr.bf16.mxu0 0
  %15775 = vmatpush2.bf16.msra.mxu0 %v10957
  %15776 = vmatprep.subr.bf16.mxu0 0
  %15777 = vmatpush2.bf16.msra.mxu0 %v10956
  %15778 = vmatprep.subr.bf16.mxu0 0
  %15779 = vmatpush2.bf16.msra.mxu0 %v10955
  %15780 = vmatprep.subr.bf16.mxu0 0
  %15781 = vmatpush2.bf16.msra.mxu0 %v10954
  %15782 = vmatprep.subr.bf16.mxu0 0
  %15783 = vmatpush2.bf16.msra.mxu0 %v10953
  %15784 = vmatprep.subr.bf16.mxu0 0
  %15785 = vmatpush2.bf16.msra.mxu0 %v10952
  %15786 = vmatprep.subr.bf16.mxu0 0
  %15787 = vmatpush2.bf16.msra.mxu0 %v10951
  %15788 = vmatprep.subr.bf16.mxu0 0
  %15789 = vmatpush2.bf16.msra.mxu0 %v10950
  %15790 = vmatprep.mubr.bf16.mxu0 %v352
  %15791 = vmatmul.mubr.bf16.gmra.mxu0 %v351
  %v15792 = vpop.f32.mrf.mxu0
  %v15793 = vadd.f32 %v15753, %v15792
  %v15794 = vpop.f32.mrf.mxu0
  %v15795 = vpop.f32.mrf.mxu0
  %v15796 = vpop.f32.mrf.mxu0
  %15797 = vdwg.mxu0
  %15798 = vmatprep.subr.bf16.mxu0 0
  %15799 = vmatpush1.bf16.msra.mxu0 %v10965
  %15800 = vmatprep.subr.bf16.mxu0 0
  %15801 = vmatpush1.bf16.msra.mxu0 %v10964
  %15802 = vmatprep.subr.bf16.mxu0 0
  %15803 = vmatpush1.bf16.msra.mxu0 %v10963
  %15804 = vmatprep.subr.bf16.mxu0 0
  %15805 = vmatpush1.bf16.msra.mxu0 %v10962
  %15806 = vmatprep.subr.bf16.mxu0 0
  %15807 = vmatpush1.bf16.msra.mxu0 %v10961
  %15808 = vmatprep.subr.bf16.mxu0 0
  %15809 = vmatpush1.bf16.msra.mxu0 %v10960
  %15810 = vmatprep.subr.bf16.mxu0 0
  %15811 = vmatpush1.bf16.msra.mxu0 %v10959
  %15812 = vmatprep.subr.bf16.mxu0 0
  %15813 = vmatpush1.bf16.msra.mxu0 %v10958
  %15814 = vmatprep.subr.bf16.mxu0 0
  %15815 = vmatpush2.bf16.msra.mxu0 %v10973
  %15816 = vmatprep.subr.bf16.mxu0 0
  %15817 = vmatpush2.bf16.msra.mxu0 %v10972
  %15818 = vmatprep.subr.bf16.mxu0 0
  %15819 = vmatpush2.bf16.msra.mxu0 %v10971
  %15820 = vmatprep.subr.bf16.mxu0 0
  %15821 = vmatpush2.bf16.msra.mxu0 %v10970
  %15822 = vmatprep.subr.bf16.mxu0 0
  %15823 = vmatpush2.bf16.msra.mxu0 %v10969
  %15824 = vmatprep.subr.bf16.mxu0 0
  %15825 = vmatpush2.bf16.msra.mxu0 %v10968
  %15826 = vmatprep.subr.bf16.mxu0 0
  %15827 = vmatpush2.bf16.msra.mxu0 %v10967
  %15828 = vmatprep.subr.bf16.mxu0 0
  %15829 = vmatpush2.bf16.msra.mxu0 %v10966
  %15830 = vmatprep.mubr.bf16.mxu0 %v354
  %15831 = vmatmul.mubr.bf16.gmra.mxu0 %v353
  %v15832 = vpop.f32.mrf.mxu0
  %v15833 = vadd.f32 %v15793, %v15832
  %v15834 = vpop.f32.mrf.mxu0
  %v15835 = vpop.f32.mrf.mxu0
  %v15836 = vpop.f32.mrf.mxu0
  %15837 = vdwg.mxu0
  %15838 = vmatprep.subr.bf16.mxu0 0
  %15839 = vmatpush1.bf16.msra.mxu0 %v10981
  %15840 = vmatprep.subr.bf16.mxu0 0
  %15841 = vmatpush1.bf16.msra.mxu0 %v10980
  %15842 = vmatprep.subr.bf16.mxu0 0
  %15843 = vmatpush1.bf16.msra.mxu0 %v10979
  %15844 = vmatprep.subr.bf16.mxu0 0
  %15845 = vmatpush1.bf16.msra.mxu0 %v10978
  %15846 = vmatprep.subr.bf16.mxu0 0
  %15847 = vmatpush1.bf16.msra.mxu0 %v10977
  %15848 = vmatprep.subr.bf16.mxu0 0
  %15849 = vmatpush1.bf16.msra.mxu0 %v10976
  %15850 = vmatprep.subr.bf16.mxu0 0
  %15851 = vmatpush1.bf16.msra.mxu0 %v10975
  %15852 = vmatprep.subr.bf16.mxu0 0
  %15853 = vmatpush1.bf16.msra.mxu0 %v10974
  %15854 = vmatprep.subr.bf16.mxu0 0
  %15855 = vmatpush2.bf16.msra.mxu0 %v10989
  %15856 = vmatprep.subr.bf16.mxu0 0
  %15857 = vmatpush2.bf16.msra.mxu0 %v10988
  %15858 = vmatprep.subr.bf16.mxu0 0
  %15859 = vmatpush2.bf16.msra.mxu0 %v10987
  %15860 = vmatprep.subr.bf16.mxu0 0
  %15861 = vmatpush2.bf16.msra.mxu0 %v10986
  %15862 = vmatprep.subr.bf16.mxu0 0
  %15863 = vmatpush2.bf16.msra.mxu0 %v10985
  %15864 = vmatprep.subr.bf16.mxu0 0
  %15865 = vmatpush2.bf16.msra.mxu0 %v10984
  %15866 = vmatprep.subr.bf16.mxu0 0
  %15867 = vmatpush2.bf16.msra.mxu0 %v10983
  %15868 = vmatprep.subr.bf16.mxu0 0
  %15869 = vmatpush2.bf16.msra.mxu0 %v10982
  %15870 = vmatprep.mubr.bf16.mxu0 %v356
  %15871 = vmatmul.mubr.bf16.gmra.mxu0 %v355
  %v15872 = vpop.f32.mrf.mxu0
  %v15873 = vadd.f32 %v15833, %v15872
  %v15874 = vpop.f32.mrf.mxu0
  %v15875 = vpop.f32.mrf.mxu0
  %v15876 = vpop.f32.mrf.mxu0
  %15877 = vdwg.mxu0
  %15878 = vmatprep.subr.bf16.mxu0 0
  %15879 = vmatpush1.bf16.msra.mxu0 %v10997
  %15880 = vmatprep.subr.bf16.mxu0 0
  %15881 = vmatpush1.bf16.msra.mxu0 %v10996
  %15882 = vmatprep.subr.bf16.mxu0 0
  %15883 = vmatpush1.bf16.msra.mxu0 %v10995
  %15884 = vmatprep.subr.bf16.mxu0 0
  %15885 = vmatpush1.bf16.msra.mxu0 %v10994
  %15886 = vmatprep.subr.bf16.mxu0 0
  %15887 = vmatpush1.bf16.msra.mxu0 %v10993
  %15888 = vmatprep.subr.bf16.mxu0 0
  %15889 = vmatpush1.bf16.msra.mxu0 %v10992
  %15890 = vmatprep.subr.bf16.mxu0 0
  %15891 = vmatpush1.bf16.msra.mxu0 %v10991
  %15892 = vmatprep.subr.bf16.mxu0 0
  %15893 = vmatpush1.bf16.msra.mxu0 %v10990
  %15894 = vmatprep.subr.bf16.mxu0 0
  %15895 = vmatpush2.bf16.msra.mxu0 %v11005
  %15896 = vmatprep.subr.bf16.mxu0 0
  %15897 = vmatpush2.bf16.msra.mxu0 %v11004
  %15898 = vmatprep.subr.bf16.mxu0 0
  %15899 = vmatpush2.bf16.msra.mxu0 %v11003
  %15900 = vmatprep.subr.bf16.mxu0 0
  %15901 = vmatpush2.bf16.msra.mxu0 %v11002
  %15902 = vmatprep.subr.bf16.mxu0 0
  %15903 = vmatpush2.bf16.msra.mxu0 %v11001
  %15904 = vmatprep.subr.bf16.mxu0 0
  %15905 = vmatpush2.bf16.msra.mxu0 %v11000
  %15906 = vmatprep.subr.bf16.mxu0 0
  %15907 = vmatpush2.bf16.msra.mxu0 %v10999
  %15908 = vmatprep.subr.bf16.mxu0 0
  %15909 = vmatpush2.bf16.msra.mxu0 %v10998
  %15910 = vmatprep.mubr.bf16.mxu0 %v358
  %15911 = vmatmul.mubr.bf16.gmra.mxu0 %v357
  %v15912 = vpop.f32.mrf.mxu0
  %v15913 = vadd.f32 %v15873, %v15912
  %v15914 = vpop.f32.mrf.mxu0
  %v15915 = vpop.f32.mrf.mxu0
  %v15916 = vpop.f32.mrf.mxu0
  %15917 = vdwg.mxu0
  %15918 = vmatprep.subr.bf16.mxu0 0
  %15919 = vmatpush1.bf16.msra.mxu0 %v11013
  %15920 = vmatprep.subr.bf16.mxu0 0
  %15921 = vmatpush1.bf16.msra.mxu0 %v11012
  %15922 = vmatprep.subr.bf16.mxu0 0
  %15923 = vmatpush1.bf16.msra.mxu0 %v11011
  %15924 = vmatprep.subr.bf16.mxu0 0
  %15925 = vmatpush1.bf16.msra.mxu0 %v11010
  %15926 = vmatprep.subr.bf16.mxu0 0
  %15927 = vmatpush1.bf16.msra.mxu0 %v11009
  %15928 = vmatprep.subr.bf16.mxu0 0
  %15929 = vmatpush1.bf16.msra.mxu0 %v11008
  %15930 = vmatprep.subr.bf16.mxu0 0
  %15931 = vmatpush1.bf16.msra.mxu0 %v11007
  %15932 = vmatprep.subr.bf16.mxu0 0
  %15933 = vmatpush1.bf16.msra.mxu0 %v11006
  %15934 = vmatprep.subr.bf16.mxu0 0
  %15935 = vmatpush2.bf16.msra.mxu0 %v11021
  %15936 = vmatprep.subr.bf16.mxu0 0
  %15937 = vmatpush2.bf16.msra.mxu0 %v11020
  %15938 = vmatprep.subr.bf16.mxu0 0
  %15939 = vmatpush2.bf16.msra.mxu0 %v11019
  %15940 = vmatprep.subr.bf16.mxu0 0
  %15941 = vmatpush2.bf16.msra.mxu0 %v11018
  %15942 = vmatprep.subr.bf16.mxu0 0
  %15943 = vmatpush2.bf16.msra.mxu0 %v11017
  %15944 = vmatprep.subr.bf16.mxu0 0
  %15945 = vmatpush2.bf16.msra.mxu0 %v11016
  %15946 = vmatprep.subr.bf16.mxu0 0
  %15947 = vmatpush2.bf16.msra.mxu0 %v11015
  %15948 = vmatprep.subr.bf16.mxu0 0
  %15949 = vmatpush2.bf16.msra.mxu0 %v11014
  %15950 = vmatprep.mubr.bf16.mxu0 %v360
  %15951 = vmatmul.mubr.bf16.gmra.mxu0 %v359
  %v15952 = vpop.f32.mrf.mxu0
  %v15953 = vadd.f32 %v15913, %v15952
  %v15954 = vpop.f32.mrf.mxu0
  %v15955 = vpop.f32.mrf.mxu0
  %v15956 = vpop.f32.mrf.mxu0
  %15957 = vdwg.mxu0
  %15958 = vmatprep.subr.bf16.mxu0 0
  %15959 = vmatpush1.bf16.msra.mxu0 %v11029
  %15960 = vmatprep.subr.bf16.mxu0 0
  %15961 = vmatpush1.bf16.msra.mxu0 %v11028
  %15962 = vmatprep.subr.bf16.mxu0 0
  %15963 = vmatpush1.bf16.msra.mxu0 %v11027
  %15964 = vmatprep.subr.bf16.mxu0 0
  %15965 = vmatpush1.bf16.msra.mxu0 %v11026
  %15966 = vmatprep.subr.bf16.mxu0 0
  %15967 = vmatpush1.bf16.msra.mxu0 %v11025
  %15968 = vmatprep.subr.bf16.mxu0 0
  %15969 = vmatpush1.bf16.msra.mxu0 %v11024
  %15970 = vmatprep.subr.bf16.mxu0 0
  %15971 = vmatpush1.bf16.msra.mxu0 %v11023
  %15972 = vmatprep.subr.bf16.mxu0 0
  %15973 = vmatpush1.bf16.msra.mxu0 %v11022
  %15974 = vmatprep.subr.bf16.mxu0 0
  %15975 = vmatpush2.bf16.msra.mxu0 %v11037
  %15976 = vmatprep.subr.bf16.mxu0 0
  %15977 = vmatpush2.bf16.msra.mxu0 %v11036
  %15978 = vmatprep.subr.bf16.mxu0 0
  %15979 = vmatpush2.bf16.msra.mxu0 %v11035
  %15980 = vmatprep.subr.bf16.mxu0 0
  %15981 = vmatpush2.bf16.msra.mxu0 %v11034
  %15982 = vmatprep.subr.bf16.mxu0 0
  %15983 = vmatpush2.bf16.msra.mxu0 %v11033
  %15984 = vmatprep.subr.bf16.mxu0 0
  %15985 = vmatpush2.bf16.msra.mxu0 %v11032
  %15986 = vmatprep.subr.bf16.mxu0 0
  %15987 = vmatpush2.bf16.msra.mxu0 %v11031
  %15988 = vmatprep.subr.bf16.mxu0 0
  %15989 = vmatpush2.bf16.msra.mxu0 %v11030
  %15990 = vmatprep.mubr.bf16.mxu0 %v362
  %15991 = vmatmul.mubr.bf16.gmra.mxu0 %v361
  %v15992 = vpop.f32.mrf.mxu0
  %v15993 = vadd.f32 %v15953, %v15992
  %v15994 = vpop.f32.mrf.mxu0
  %v15995 = vpop.f32.mrf.mxu0
  %v15996 = vpop.f32.mrf.mxu0
  %15997 = vdwg.mxu0
  %15998 = vmatprep.subr.bf16.mxu0 0
  %15999 = vmatpush1.bf16.msra.mxu0 %v11045
  %16000 = vmatprep.subr.bf16.mxu0 0
  %16001 = vmatpush1.bf16.msra.mxu0 %v11044
  %16002 = vmatprep.subr.bf16.mxu0 0
  %16003 = vmatpush1.bf16.msra.mxu0 %v11043
  %16004 = vmatprep.subr.bf16.mxu0 0
  %16005 = vmatpush1.bf16.msra.mxu0 %v11042
  %16006 = vmatprep.subr.bf16.mxu0 0
  %16007 = vmatpush1.bf16.msra.mxu0 %v11041
  %16008 = vmatprep.subr.bf16.mxu0 0
  %16009 = vmatpush1.bf16.msra.mxu0 %v11040
  %16010 = vmatprep.subr.bf16.mxu0 0
  %16011 = vmatpush1.bf16.msra.mxu0 %v11039
  %16012 = vmatprep.subr.bf16.mxu0 0
  %16013 = vmatpush1.bf16.msra.mxu0 %v11038
  %16014 = vmatprep.subr.bf16.mxu0 0
  %16015 = vmatpush2.bf16.msra.mxu0 %v11053
  %16016 = vmatprep.subr.bf16.mxu0 0
  %16017 = vmatpush2.bf16.msra.mxu0 %v11052
  %16018 = vmatprep.subr.bf16.mxu0 0
  %16019 = vmatpush2.bf16.msra.mxu0 %v11051
  %16020 = vmatprep.subr.bf16.mxu0 0
  %16021 = vmatpush2.bf16.msra.mxu0 %v11050
  %16022 = vmatprep.subr.bf16.mxu0 0
  %16023 = vmatpush2.bf16.msra.mxu0 %v11049
  %16024 = vmatprep.subr.bf16.mxu0 0
  %16025 = vmatpush2.bf16.msra.mxu0 %v11048
  %16026 = vmatprep.subr.bf16.mxu0 0
  %16027 = vmatpush2.bf16.msra.mxu0 %v11047
  %16028 = vmatprep.subr.bf16.mxu0 0
  %16029 = vmatpush2.bf16.msra.mxu0 %v11046
  %16030 = vmatprep.mubr.bf16.mxu0 %v364
  %16031 = vmatmul.mubr.bf16.gmra.mxu0 %v363
  %v16032 = vpop.f32.mrf.mxu0
  %v16033 = vadd.f32 %v15993, %v16032
  %v16034 = vpop.f32.mrf.mxu0
  %v16035 = vpop.f32.mrf.mxu0
  %v16036 = vpop.f32.mrf.mxu0
  %16037 = vdwg.mxu0
  %16038 = vmatprep.subr.bf16.mxu0 0
  %16039 = vmatpush1.bf16.msra.mxu0 %v11061
  %16040 = vmatprep.subr.bf16.mxu0 0
  %16041 = vmatpush1.bf16.msra.mxu0 %v11060
  %16042 = vmatprep.subr.bf16.mxu0 0
  %16043 = vmatpush1.bf16.msra.mxu0 %v11059
  %16044 = vmatprep.subr.bf16.mxu0 0
  %16045 = vmatpush1.bf16.msra.mxu0 %v11058
  %16046 = vmatprep.subr.bf16.mxu0 0
  %16047 = vmatpush1.bf16.msra.mxu0 %v11057
  %16048 = vmatprep.subr.bf16.mxu0 0
  %16049 = vmatpush1.bf16.msra.mxu0 %v11056
  %16050 = vmatprep.subr.bf16.mxu0 0
  %16051 = vmatpush1.bf16.msra.mxu0 %v11055
  %16052 = vmatprep.subr.bf16.mxu0 0
  %16053 = vmatpush1.bf16.msra.mxu0 %v11054
  %16054 = vmatprep.subr.bf16.mxu0 0
  %16055 = vmatpush2.bf16.msra.mxu0 %v11069
  %16056 = vmatprep.subr.bf16.mxu0 0
  %16057 = vmatpush2.bf16.msra.mxu0 %v11068
  %16058 = vmatprep.subr.bf16.mxu0 0
  %16059 = vmatpush2.bf16.msra.mxu0 %v11067
  %16060 = vmatprep.subr.bf16.mxu0 0
  %16061 = vmatpush2.bf16.msra.mxu0 %v11066
  %16062 = vmatprep.subr.bf16.mxu0 0
  %16063 = vmatpush2.bf16.msra.mxu0 %v11065
  %16064 = vmatprep.subr.bf16.mxu0 0
  %16065 = vmatpush2.bf16.msra.mxu0 %v11064
  %16066 = vmatprep.subr.bf16.mxu0 0
  %16067 = vmatpush2.bf16.msra.mxu0 %v11063
  %16068 = vmatprep.subr.bf16.mxu0 0
  %16069 = vmatpush2.bf16.msra.mxu0 %v11062
  %16070 = vmatprep.mubr.bf16.mxu0 %v366
  %16071 = vmatmul.mubr.bf16.gmra.mxu0 %v365
  %v16072 = vpop.f32.mrf.mxu0
  %v16073 = vadd.f32 %v16033, %v16072
  %v16074 = vpop.f32.mrf.mxu0
  %v16075 = vpop.f32.mrf.mxu0
  %v16076 = vpop.f32.mrf.mxu0
  %16077 = vdwg.mxu0
  %16078 = vmatprep.subr.bf16.mxu0 0
  %16079 = vmatpush1.bf16.msra.mxu0 %v11077
  %16080 = vmatprep.subr.bf16.mxu0 0
  %16081 = vmatpush1.bf16.msra.mxu0 %v11076
  %16082 = vmatprep.subr.bf16.mxu0 0
  %16083 = vmatpush1.bf16.msra.mxu0 %v11075
  %16084 = vmatprep.subr.bf16.mxu0 0
  %16085 = vmatpush1.bf16.msra.mxu0 %v11074
  %16086 = vmatprep.subr.bf16.mxu0 0
  %16087 = vmatpush1.bf16.msra.mxu0 %v11073
  %16088 = vmatprep.subr.bf16.mxu0 0
  %16089 = vmatpush1.bf16.msra.mxu0 %v11072
  %16090 = vmatprep.subr.bf16.mxu0 0
  %16091 = vmatpush1.bf16.msra.mxu0 %v11071
  %16092 = vmatprep.subr.bf16.mxu0 0
  %16093 = vmatpush1.bf16.msra.mxu0 %v11070
  %16094 = vmatprep.subr.bf16.mxu0 0
  %16095 = vmatpush2.bf16.msra.mxu0 %v11085
  %16096 = vmatprep.subr.bf16.mxu0 0
  %16097 = vmatpush2.bf16.msra.mxu0 %v11084
  %16098 = vmatprep.subr.bf16.mxu0 0
  %16099 = vmatpush2.bf16.msra.mxu0 %v11083
  %16100 = vmatprep.subr.bf16.mxu0 0
  %16101 = vmatpush2.bf16.msra.mxu0 %v11082
  %16102 = vmatprep.subr.bf16.mxu0 0
  %16103 = vmatpush2.bf16.msra.mxu0 %v11081
  %16104 = vmatprep.subr.bf16.mxu0 0
  %16105 = vmatpush2.bf16.msra.mxu0 %v11080
  %16106 = vmatprep.subr.bf16.mxu0 0
  %16107 = vmatpush2.bf16.msra.mxu0 %v11079
  %16108 = vmatprep.subr.bf16.mxu0 0
  %16109 = vmatpush2.bf16.msra.mxu0 %v11078
  %16110 = vmatprep.mubr.bf16.mxu0 %v368
  %16111 = vmatmul.mubr.bf16.gmra.mxu0 %v367
  %v16112 = vpop.f32.mrf.mxu0
  %v16113 = vadd.f32 %v16073, %v16112
  %v16114 = vpop.f32.mrf.mxu0
  %v16115 = vpop.f32.mrf.mxu0
  %v16116 = vpop.f32.mrf.mxu0
  %16117 = vdwg.mxu0
  %16118 = vmatprep.subr.bf16.mxu0 0
  %16119 = vmatpush1.bf16.msra.mxu0 %v11093
  %16120 = vmatprep.subr.bf16.mxu0 0
  %16121 = vmatpush1.bf16.msra.mxu0 %v11092
  %16122 = vmatprep.subr.bf16.mxu0 0
  %16123 = vmatpush1.bf16.msra.mxu0 %v11091
  %16124 = vmatprep.subr.bf16.mxu0 0
  %16125 = vmatpush1.bf16.msra.mxu0 %v11090
  %16126 = vmatprep.subr.bf16.mxu0 0
  %16127 = vmatpush1.bf16.msra.mxu0 %v11089
  %16128 = vmatprep.subr.bf16.mxu0 0
  %16129 = vmatpush1.bf16.msra.mxu0 %v11088
  %16130 = vmatprep.subr.bf16.mxu0 0
  %16131 = vmatpush1.bf16.msra.mxu0 %v11087
  %16132 = vmatprep.subr.bf16.mxu0 0
  %16133 = vmatpush1.bf16.msra.mxu0 %v11086
  %16134 = vmatprep.subr.bf16.mxu0 0
  %16135 = vmatpush2.bf16.msra.mxu0 %v11101
  %16136 = vmatprep.subr.bf16.mxu0 0
  %16137 = vmatpush2.bf16.msra.mxu0 %v11100
  %16138 = vmatprep.subr.bf16.mxu0 0
  %16139 = vmatpush2.bf16.msra.mxu0 %v11099
  %16140 = vmatprep.subr.bf16.mxu0 0
  %16141 = vmatpush2.bf16.msra.mxu0 %v11098
  %16142 = vmatprep.subr.bf16.mxu0 0
  %16143 = vmatpush2.bf16.msra.mxu0 %v11097
  %16144 = vmatprep.subr.bf16.mxu0 0
  %16145 = vmatpush2.bf16.msra.mxu0 %v11096
  %16146 = vmatprep.subr.bf16.mxu0 0
  %16147 = vmatpush2.bf16.msra.mxu0 %v11095
  %16148 = vmatprep.subr.bf16.mxu0 0
  %16149 = vmatpush2.bf16.msra.mxu0 %v11094
  %16150 = vmatprep.mubr.bf16.mxu0 %v370
  %16151 = vmatmul.mubr.bf16.gmra.mxu0 %v369
  %v16152 = vpop.f32.mrf.mxu0
  %v16153 = vadd.f32 %v16113, %v16152
  %v16154 = vpop.f32.mrf.mxu0
  %v16155 = vpop.f32.mrf.mxu0
  %v16156 = vpop.f32.mrf.mxu0
  %16157 = vdwg.mxu0
  %16158 = vmatprep.subr.bf16.mxu0 0
  %16159 = vmatpush1.bf16.msra.mxu0 %v11109
  %16160 = vmatprep.subr.bf16.mxu0 0
  %16161 = vmatpush1.bf16.msra.mxu0 %v11108
  %16162 = vmatprep.subr.bf16.mxu0 0
  %16163 = vmatpush1.bf16.msra.mxu0 %v11107
  %16164 = vmatprep.subr.bf16.mxu0 0
  %16165 = vmatpush1.bf16.msra.mxu0 %v11106
  %16166 = vmatprep.subr.bf16.mxu0 0
  %16167 = vmatpush1.bf16.msra.mxu0 %v11105
  %16168 = vmatprep.subr.bf16.mxu0 0
  %16169 = vmatpush1.bf16.msra.mxu0 %v11104
  %16170 = vmatprep.subr.bf16.mxu0 0
  %16171 = vmatpush1.bf16.msra.mxu0 %v11103
  %16172 = vmatprep.subr.bf16.mxu0 0
  %16173 = vmatpush1.bf16.msra.mxu0 %v11102
  %16174 = vmatprep.subr.bf16.mxu0 0
  %16175 = vmatpush2.bf16.msra.mxu0 %v11117
  %16176 = vmatprep.subr.bf16.mxu0 0
  %16177 = vmatpush2.bf16.msra.mxu0 %v11116
  %16178 = vmatprep.subr.bf16.mxu0 0
  %16179 = vmatpush2.bf16.msra.mxu0 %v11115
  %16180 = vmatprep.subr.bf16.mxu0 0
  %16181 = vmatpush2.bf16.msra.mxu0 %v11114
  %16182 = vmatprep.subr.bf16.mxu0 0
  %16183 = vmatpush2.bf16.msra.mxu0 %v11113
  %16184 = vmatprep.subr.bf16.mxu0 0
  %16185 = vmatpush2.bf16.msra.mxu0 %v11112
  %16186 = vmatprep.subr.bf16.mxu0 0
  %16187 = vmatpush2.bf16.msra.mxu0 %v11111
  %16188 = vmatprep.subr.bf16.mxu0 0
  %16189 = vmatpush2.bf16.msra.mxu0 %v11110
  %16190 = vmatprep.mubr.bf16.mxu0 %v372
  %16191 = vmatmul.mubr.bf16.gmra.mxu0 %v371
  %v16192 = vpop.f32.mrf.mxu0
  %v16193 = vadd.f32 %v16153, %v16192
  %v16194 = vpop.f32.mrf.mxu0
  %v16195 = vpop.f32.mrf.mxu0
  %v16196 = vpop.f32.mrf.mxu0
  %16197 = vdwg.mxu0
  %16198 = vmatprep.subr.bf16.mxu0 0
  %16199 = vmatpush1.bf16.msra.mxu0 %v11125
  %16200 = vmatprep.subr.bf16.mxu0 0
  %16201 = vmatpush1.bf16.msra.mxu0 %v11124
  %16202 = vmatprep.subr.bf16.mxu0 0
  %16203 = vmatpush1.bf16.msra.mxu0 %v11123
  %16204 = vmatprep.subr.bf16.mxu0 0
  %16205 = vmatpush1.bf16.msra.mxu0 %v11122
  %16206 = vmatprep.subr.bf16.mxu0 0
  %16207 = vmatpush1.bf16.msra.mxu0 %v11121
  %16208 = vmatprep.subr.bf16.mxu0 0
  %16209 = vmatpush1.bf16.msra.mxu0 %v11120
  %16210 = vmatprep.subr.bf16.mxu0 0
  %16211 = vmatpush1.bf16.msra.mxu0 %v11119
  %16212 = vmatprep.subr.bf16.mxu0 0
  %16213 = vmatpush1.bf16.msra.mxu0 %v11118
  %16214 = vmatprep.subr.bf16.mxu0 0
  %16215 = vmatpush2.bf16.msra.mxu0 %v11133
  %16216 = vmatprep.subr.bf16.mxu0 0
  %16217 = vmatpush2.bf16.msra.mxu0 %v11132
  %16218 = vmatprep.subr.bf16.mxu0 0
  %16219 = vmatpush2.bf16.msra.mxu0 %v11131
  %16220 = vmatprep.subr.bf16.mxu0 0
  %16221 = vmatpush2.bf16.msra.mxu0 %v11130
  %16222 = vmatprep.subr.bf16.mxu0 0
  %16223 = vmatpush2.bf16.msra.mxu0 %v11129
  %16224 = vmatprep.subr.bf16.mxu0 0
  %16225 = vmatpush2.bf16.msra.mxu0 %v11128
  %16226 = vmatprep.subr.bf16.mxu0 0
  %16227 = vmatpush2.bf16.msra.mxu0 %v11127
  %16228 = vmatprep.subr.bf16.mxu0 0
  %16229 = vmatpush2.bf16.msra.mxu0 %v11126
  %16230 = vmatprep.mubr.bf16.mxu0 %v374
  %16231 = vmatmul.mubr.bf16.gmra.mxu0 %v373
  %v16232 = vpop.f32.mrf.mxu0
  %v16233 = vadd.f32 %v16193, %v16232
  %v16234 = vpop.f32.mrf.mxu0
  %v16235 = vpop.f32.mrf.mxu0
  %v16236 = vpop.f32.mrf.mxu0
  %16237 = vdwg.mxu0
  %16238 = vmatprep.subr.bf16.mxu0 0
  %16239 = vmatpush1.bf16.msra.mxu0 %v11141
  %16240 = vmatprep.subr.bf16.mxu0 0
  %16241 = vmatpush1.bf16.msra.mxu0 %v11140
  %16242 = vmatprep.subr.bf16.mxu0 0
  %16243 = vmatpush1.bf16.msra.mxu0 %v11139
  %16244 = vmatprep.subr.bf16.mxu0 0
  %16245 = vmatpush1.bf16.msra.mxu0 %v11138
  %16246 = vmatprep.subr.bf16.mxu0 0
  %16247 = vmatpush1.bf16.msra.mxu0 %v11137
  %16248 = vmatprep.subr.bf16.mxu0 0
  %16249 = vmatpush1.bf16.msra.mxu0 %v11136
  %16250 = vmatprep.subr.bf16.mxu0 0
  %16251 = vmatpush1.bf16.msra.mxu0 %v11135
  %16252 = vmatprep.subr.bf16.mxu0 0
  %16253 = vmatpush1.bf16.msra.mxu0 %v11134
  %16254 = vmatprep.subr.bf16.mxu0 0
  %16255 = vmatpush2.bf16.msra.mxu0 %v11149
  %16256 = vmatprep.subr.bf16.mxu0 0
  %16257 = vmatpush2.bf16.msra.mxu0 %v11148
  %16258 = vmatprep.subr.bf16.mxu0 0
  %16259 = vmatpush2.bf16.msra.mxu0 %v11147
  %16260 = vmatprep.subr.bf16.mxu0 0
  %16261 = vmatpush2.bf16.msra.mxu0 %v11146
  %16262 = vmatprep.subr.bf16.mxu0 0
  %16263 = vmatpush2.bf16.msra.mxu0 %v11145
  %16264 = vmatprep.subr.bf16.mxu0 0
  %16265 = vmatpush2.bf16.msra.mxu0 %v11144
  %16266 = vmatprep.subr.bf16.mxu0 0
  %16267 = vmatpush2.bf16.msra.mxu0 %v11143
  %16268 = vmatprep.subr.bf16.mxu0 0
  %16269 = vmatpush2.bf16.msra.mxu0 %v11142
  %16270 = vmatprep.mubr.bf16.mxu0 %v376
  %16271 = vmatmul.mubr.bf16.gmra.mxu0 %v375
  %v16272 = vpop.f32.mrf.mxu0
  %v16273 = vadd.f32 %v16233, %v16272
  %v16274 = vpop.f32.mrf.mxu0
  %v16275 = vpop.f32.mrf.mxu0
  %v16276 = vpop.f32.mrf.mxu0
  %16277 = vdwg.mxu0
  %16278 = vmatprep.subr.bf16.mxu0 0
  %16279 = vmatpush1.bf16.msra.mxu0 %v11157
  %16280 = vmatprep.subr.bf16.mxu0 0
  %16281 = vmatpush1.bf16.msra.mxu0 %v11156
  %16282 = vmatprep.subr.bf16.mxu0 0
  %16283 = vmatpush1.bf16.msra.mxu0 %v11155
  %16284 = vmatprep.subr.bf16.mxu0 0
  %16285 = vmatpush1.bf16.msra.mxu0 %v11154
  %16286 = vmatprep.subr.bf16.mxu0 0
  %16287 = vmatpush1.bf16.msra.mxu0 %v11153
  %16288 = vmatprep.subr.bf16.mxu0 0
  %16289 = vmatpush1.bf16.msra.mxu0 %v11152
  %16290 = vmatprep.subr.bf16.mxu0 0
  %16291 = vmatpush1.bf16.msra.mxu0 %v11151
  %16292 = vmatprep.subr.bf16.mxu0 0
  %16293 = vmatpush1.bf16.msra.mxu0 %v11150
  %16294 = vmatprep.subr.bf16.mxu0 0
  %16295 = vmatpush2.bf16.msra.mxu0 %v11165
  %16296 = vmatprep.subr.bf16.mxu0 0
  %16297 = vmatpush2.bf16.msra.mxu0 %v11164
  %16298 = vmatprep.subr.bf16.mxu0 0
  %16299 = vmatpush2.bf16.msra.mxu0 %v11163
  %16300 = vmatprep.subr.bf16.mxu0 0
  %16301 = vmatpush2.bf16.msra.mxu0 %v11162
  %16302 = vmatprep.subr.bf16.mxu0 0
  %16303 = vmatpush2.bf16.msra.mxu0 %v11161
  %16304 = vmatprep.subr.bf16.mxu0 0
  %16305 = vmatpush2.bf16.msra.mxu0 %v11160
  %16306 = vmatprep.subr.bf16.mxu0 0
  %16307 = vmatpush2.bf16.msra.mxu0 %v11159
  %16308 = vmatprep.subr.bf16.mxu0 0
  %16309 = vmatpush2.bf16.msra.mxu0 %v11158
  %16310 = vmatprep.mubr.bf16.mxu0 %v378
  %16311 = vmatmul.mubr.bf16.gmra.mxu0 %v377
  %v16312 = vpop.f32.mrf.mxu0
  %v16313 = vadd.f32 %v16273, %v16312
  %v16314 = vpop.f32.mrf.mxu0
  %v16315 = vpop.f32.mrf.mxu0
  %v16316 = vpop.f32.mrf.mxu0
  %16317 = vdwg.mxu0
  %16318 = vmatprep.subr.bf16.mxu0 0
  %16319 = vmatpush1.bf16.msra.mxu0 %v11173
  %16320 = vmatprep.subr.bf16.mxu0 0
  %16321 = vmatpush1.bf16.msra.mxu0 %v11172
  %16322 = vmatprep.subr.bf16.mxu0 0
  %16323 = vmatpush1.bf16.msra.mxu0 %v11171
  %16324 = vmatprep.subr.bf16.mxu0 0
  %16325 = vmatpush1.bf16.msra.mxu0 %v11170
  %16326 = vmatprep.subr.bf16.mxu0 0
  %16327 = vmatpush1.bf16.msra.mxu0 %v11169
  %16328 = vmatprep.subr.bf16.mxu0 0
  %16329 = vmatpush1.bf16.msra.mxu0 %v11168
  %16330 = vmatprep.subr.bf16.mxu0 0
  %16331 = vmatpush1.bf16.msra.mxu0 %v11167
  %16332 = vmatprep.subr.bf16.mxu0 0
  %16333 = vmatpush1.bf16.msra.mxu0 %v11166
  %16334 = vmatprep.subr.bf16.mxu0 0
  %16335 = vmatpush2.bf16.msra.mxu0 %v11181
  %16336 = vmatprep.subr.bf16.mxu0 0
  %16337 = vmatpush2.bf16.msra.mxu0 %v11180
  %16338 = vmatprep.subr.bf16.mxu0 0
  %16339 = vmatpush2.bf16.msra.mxu0 %v11179
  %16340 = vmatprep.subr.bf16.mxu0 0
  %16341 = vmatpush2.bf16.msra.mxu0 %v11178
  %16342 = vmatprep.subr.bf16.mxu0 0
  %16343 = vmatpush2.bf16.msra.mxu0 %v11177
  %16344 = vmatprep.subr.bf16.mxu0 0
  %16345 = vmatpush2.bf16.msra.mxu0 %v11176
  %16346 = vmatprep.subr.bf16.mxu0 0
  %16347 = vmatpush2.bf16.msra.mxu0 %v11175
  %16348 = vmatprep.subr.bf16.mxu0 0
  %16349 = vmatpush2.bf16.msra.mxu0 %v11174
  %16350 = vmatprep.mubr.bf16.mxu0 %v380
  %16351 = vmatmul.mubr.bf16.gmra.mxu0 %v379
  %v16352 = vpop.f32.mrf.mxu0
  %v16353 = vadd.f32 %v16313, %v16352
  %v16354 = vpop.f32.mrf.mxu0
  %v16355 = vpop.f32.mrf.mxu0
  %v16356 = vpop.f32.mrf.mxu0
  %16357 = vdwg.mxu0
  %16358 = vmatprep.subr.bf16.mxu0 0
  %16359 = vmatpush1.bf16.msra.mxu0 %v11189
  %16360 = vmatprep.subr.bf16.mxu0 0
  %16361 = vmatpush1.bf16.msra.mxu0 %v11188
  %16362 = vmatprep.subr.bf16.mxu0 0
  %16363 = vmatpush1.bf16.msra.mxu0 %v11187
  %16364 = vmatprep.subr.bf16.mxu0 0
  %16365 = vmatpush1.bf16.msra.mxu0 %v11186
  %16366 = vmatprep.subr.bf16.mxu0 0
  %16367 = vmatpush1.bf16.msra.mxu0 %v11185
  %16368 = vmatprep.subr.bf16.mxu0 0
  %16369 = vmatpush1.bf16.msra.mxu0 %v11184
  %16370 = vmatprep.subr.bf16.mxu0 0
  %16371 = vmatpush1.bf16.msra.mxu0 %v11183
  %16372 = vmatprep.subr.bf16.mxu0 0
  %16373 = vmatpush1.bf16.msra.mxu0 %v11182
  %16374 = vmatprep.subr.bf16.mxu0 0
  %16375 = vmatpush2.bf16.msra.mxu0 %v11197
  %16376 = vmatprep.subr.bf16.mxu0 0
  %16377 = vmatpush2.bf16.msra.mxu0 %v11196
  %16378 = vmatprep.subr.bf16.mxu0 0
  %16379 = vmatpush2.bf16.msra.mxu0 %v11195
  %16380 = vmatprep.subr.bf16.mxu0 0
  %16381 = vmatpush2.bf16.msra.mxu0 %v11194
  %16382 = vmatprep.subr.bf16.mxu0 0
  %16383 = vmatpush2.bf16.msra.mxu0 %v11193
  %16384 = vmatprep.subr.bf16.mxu0 0
  %16385 = vmatpush2.bf16.msra.mxu0 %v11192
  %16386 = vmatprep.subr.bf16.mxu0 0
  %16387 = vmatpush2.bf16.msra.mxu0 %v11191
  %16388 = vmatprep.subr.bf16.mxu0 0
  %16389 = vmatpush2.bf16.msra.mxu0 %v11190
  %16390 = vmatprep.mubr.bf16.mxu0 %v382
  %16391 = vmatmul.mubr.bf16.gmra.mxu0 %v381
  %v16392 = vpop.f32.mrf.mxu0
  %v16393 = vadd.f32 %v16353, %v16392
  %v16394 = vpop.f32.mrf.mxu0
  %v16395 = vpop.f32.mrf.mxu0
  %v16396 = vpop.f32.mrf.mxu0
  %16397 = vdwg.mxu0
  %16398 = vmatprep.subr.bf16.mxu0 0
  %16399 = vmatpush1.bf16.msra.mxu0 %v11205
  %16400 = vmatprep.subr.bf16.mxu0 0
  %16401 = vmatpush1.bf16.msra.mxu0 %v11204
  %16402 = vmatprep.subr.bf16.mxu0 0
  %16403 = vmatpush1.bf16.msra.mxu0 %v11203
  %16404 = vmatprep.subr.bf16.mxu0 0
  %16405 = vmatpush1.bf16.msra.mxu0 %v11202
  %16406 = vmatprep.subr.bf16.mxu0 0
  %16407 = vmatpush1.bf16.msra.mxu0 %v11201
  %16408 = vmatprep.subr.bf16.mxu0 0
  %16409 = vmatpush1.bf16.msra.mxu0 %v11200
  %16410 = vmatprep.subr.bf16.mxu0 0
  %16411 = vmatpush1.bf16.msra.mxu0 %v11199
  %16412 = vmatprep.subr.bf16.mxu0 0
  %16413 = vmatpush1.bf16.msra.mxu0 %v11198
  %16414 = vmatprep.subr.bf16.mxu0 0
  %16415 = vmatpush2.bf16.msra.mxu0 %v11213
  %16416 = vmatprep.subr.bf16.mxu0 0
  %16417 = vmatpush2.bf16.msra.mxu0 %v11212
  %16418 = vmatprep.subr.bf16.mxu0 0
  %16419 = vmatpush2.bf16.msra.mxu0 %v11211
  %16420 = vmatprep.subr.bf16.mxu0 0
  %16421 = vmatpush2.bf16.msra.mxu0 %v11210
  %16422 = vmatprep.subr.bf16.mxu0 0
  %16423 = vmatpush2.bf16.msra.mxu0 %v11209
  %16424 = vmatprep.subr.bf16.mxu0 0
  %16425 = vmatpush2.bf16.msra.mxu0 %v11208
  %16426 = vmatprep.subr.bf16.mxu0 0
  %16427 = vmatpush2.bf16.msra.mxu0 %v11207
  %16428 = vmatprep.subr.bf16.mxu0 0
  %16429 = vmatpush2.bf16.msra.mxu0 %v11206
  %16430 = vmatprep.mubr.bf16.mxu0 %v384
  %16431 = vmatmul.mubr.bf16.gmra.mxu0 %v383
  %v16432 = vpop.f32.mrf.mxu0
  %v16433 = vadd.f32 %v16393, %v16432
  %v16434 = vpop.f32.mrf.mxu0
  %v16435 = vpop.f32.mrf.mxu0
  %v16436 = vpop.f32.mrf.mxu0
  %16437 = vdwg.mxu0
  %16438 = vmatprep.subr.bf16.mxu0 0
  %16439 = vmatpush1.bf16.msra.mxu0 %v11221
  %16440 = vmatprep.subr.bf16.mxu0 0
  %16441 = vmatpush1.bf16.msra.mxu0 %v11220
  %16442 = vmatprep.subr.bf16.mxu0 0
  %16443 = vmatpush1.bf16.msra.mxu0 %v11219
  %16444 = vmatprep.subr.bf16.mxu0 0
  %16445 = vmatpush1.bf16.msra.mxu0 %v11218
  %16446 = vmatprep.subr.bf16.mxu0 0
  %16447 = vmatpush1.bf16.msra.mxu0 %v11217
  %16448 = vmatprep.subr.bf16.mxu0 0
  %16449 = vmatpush1.bf16.msra.mxu0 %v11216
  %16450 = vmatprep.subr.bf16.mxu0 0
  %16451 = vmatpush1.bf16.msra.mxu0 %v11215
  %16452 = vmatprep.subr.bf16.mxu0 0
  %16453 = vmatpush1.bf16.msra.mxu0 %v11214
  %16454 = vmatprep.subr.bf16.mxu0 0
  %16455 = vmatpush2.bf16.msra.mxu0 %v11229
  %16456 = vmatprep.subr.bf16.mxu0 0
  %16457 = vmatpush2.bf16.msra.mxu0 %v11228
  %16458 = vmatprep.subr.bf16.mxu0 0
  %16459 = vmatpush2.bf16.msra.mxu0 %v11227
  %16460 = vmatprep.subr.bf16.mxu0 0
  %16461 = vmatpush2.bf16.msra.mxu0 %v11226
  %16462 = vmatprep.subr.bf16.mxu0 0
  %16463 = vmatpush2.bf16.msra.mxu0 %v11225
  %16464 = vmatprep.subr.bf16.mxu0 0
  %16465 = vmatpush2.bf16.msra.mxu0 %v11224
  %16466 = vmatprep.subr.bf16.mxu0 0
  %16467 = vmatpush2.bf16.msra.mxu0 %v11223
  %16468 = vmatprep.subr.bf16.mxu0 0
  %16469 = vmatpush2.bf16.msra.mxu0 %v11222
  %16470 = vmatprep.mubr.bf16.mxu0 %v386
  %16471 = vmatmul.mubr.bf16.gmra.mxu0 %v385
  %v16472 = vpop.f32.mrf.mxu0
  %v16473 = vadd.f32 %v16433, %v16472
  %v16474 = vpop.f32.mrf.mxu0
  %v16475 = vpop.f32.mrf.mxu0
  %v16476 = vpop.f32.mrf.mxu0
  %16477 = vdwg.mxu0
  %16478 = vmatprep.subr.bf16.mxu0 0
  %16479 = vmatpush1.bf16.msra.mxu0 %v11237
  %16480 = vmatprep.subr.bf16.mxu0 0
  %16481 = vmatpush1.bf16.msra.mxu0 %v11236
  %16482 = vmatprep.subr.bf16.mxu0 0
  %16483 = vmatpush1.bf16.msra.mxu0 %v11235
  %16484 = vmatprep.subr.bf16.mxu0 0
  %16485 = vmatpush1.bf16.msra.mxu0 %v11234
  %16486 = vmatprep.subr.bf16.mxu0 0
  %16487 = vmatpush1.bf16.msra.mxu0 %v11233
  %16488 = vmatprep.subr.bf16.mxu0 0
  %16489 = vmatpush1.bf16.msra.mxu0 %v11232
  %16490 = vmatprep.subr.bf16.mxu0 0
  %16491 = vmatpush1.bf16.msra.mxu0 %v11231
  %16492 = vmatprep.subr.bf16.mxu0 0
  %16493 = vmatpush1.bf16.msra.mxu0 %v11230
  %16494 = vmatprep.subr.bf16.mxu0 0
  %16495 = vmatpush2.bf16.msra.mxu0 %v11245
  %16496 = vmatprep.subr.bf16.mxu0 0
  %16497 = vmatpush2.bf16.msra.mxu0 %v11244
  %16498 = vmatprep.subr.bf16.mxu0 0
  %16499 = vmatpush2.bf16.msra.mxu0 %v11243
  %16500 = vmatprep.subr.bf16.mxu0 0
  %16501 = vmatpush2.bf16.msra.mxu0 %v11242
  %16502 = vmatprep.subr.bf16.mxu0 0
  %16503 = vmatpush2.bf16.msra.mxu0 %v11241
  %16504 = vmatprep.subr.bf16.mxu0 0
  %16505 = vmatpush2.bf16.msra.mxu0 %v11240
  %16506 = vmatprep.subr.bf16.mxu0 0
  %16507 = vmatpush2.bf16.msra.mxu0 %v11239
  %16508 = vmatprep.subr.bf16.mxu0 0
  %16509 = vmatpush2.bf16.msra.mxu0 %v11238
  %16510 = vmatprep.mubr.bf16.mxu0 %v388
  %16511 = vmatmul.mubr.bf16.gmra.mxu0 %v387
  %v16512 = vpop.f32.mrf.mxu0
  %v16513 = vadd.f32 %v16473, %v16512
  %v16514 = vpop.f32.mrf.mxu0
  %v16515 = vpop.f32.mrf.mxu0
  %v16516 = vpop.f32.mrf.mxu0
  %16517 = vdwg.mxu0
  %16518 = vmatprep.subr.bf16.mxu0 0
  %16519 = vmatpush1.bf16.msra.mxu0 %v11253
  %16520 = vmatprep.subr.bf16.mxu0 0
  %16521 = vmatpush1.bf16.msra.mxu0 %v11252
  %16522 = vmatprep.subr.bf16.mxu0 0
  %16523 = vmatpush1.bf16.msra.mxu0 %v11251
  %16524 = vmatprep.subr.bf16.mxu0 0
  %16525 = vmatpush1.bf16.msra.mxu0 %v11250
  %16526 = vmatprep.subr.bf16.mxu0 0
  %16527 = vmatpush1.bf16.msra.mxu0 %v11249
  %16528 = vmatprep.subr.bf16.mxu0 0
  %16529 = vmatpush1.bf16.msra.mxu0 %v11248
  %16530 = vmatprep.subr.bf16.mxu0 0
  %16531 = vmatpush1.bf16.msra.mxu0 %v11247
  %16532 = vmatprep.subr.bf16.mxu0 0
  %16533 = vmatpush1.bf16.msra.mxu0 %v11246
  %16534 = vmatprep.subr.bf16.mxu0 0
  %16535 = vmatpush2.bf16.msra.mxu0 %v11261
  %16536 = vmatprep.subr.bf16.mxu0 0
  %16537 = vmatpush2.bf16.msra.mxu0 %v11260
  %16538 = vmatprep.subr.bf16.mxu0 0
  %16539 = vmatpush2.bf16.msra.mxu0 %v11259
  %16540 = vmatprep.subr.bf16.mxu0 0
  %16541 = vmatpush2.bf16.msra.mxu0 %v11258
  %16542 = vmatprep.subr.bf16.mxu0 0
  %16543 = vmatpush2.bf16.msra.mxu0 %v11257
  %16544 = vmatprep.subr.bf16.mxu0 0
  %16545 = vmatpush2.bf16.msra.mxu0 %v11256
  %16546 = vmatprep.subr.bf16.mxu0 0
  %16547 = vmatpush2.bf16.msra.mxu0 %v11255
  %16548 = vmatprep.subr.bf16.mxu0 0
  %16549 = vmatpush2.bf16.msra.mxu0 %v11254
  %16550 = vmatprep.mubr.bf16.mxu0 %v390
  %16551 = vmatmul.mubr.bf16.gmra.mxu0 %v389
  %v16552 = vpop.f32.mrf.mxu0
  %v16553 = vadd.f32 %v16513, %v16552
  %v16554 = vpop.f32.mrf.mxu0
  %v16555 = vpop.f32.mrf.mxu0
  %v16556 = vpop.f32.mrf.mxu0
  %16557 = vdwg.mxu0
  %16558 = vmatprep.subr.bf16.mxu0 0
  %16559 = vmatpush1.bf16.msra.mxu0 %v11269
  %16560 = vmatprep.subr.bf16.mxu0 0
  %16561 = vmatpush1.bf16.msra.mxu0 %v11268
  %16562 = vmatprep.subr.bf16.mxu0 0
  %16563 = vmatpush1.bf16.msra.mxu0 %v11267
  %16564 = vmatprep.subr.bf16.mxu0 0
  %16565 = vmatpush1.bf16.msra.mxu0 %v11266
  %16566 = vmatprep.subr.bf16.mxu0 0
  %16567 = vmatpush1.bf16.msra.mxu0 %v11265
  %16568 = vmatprep.subr.bf16.mxu0 0
  %16569 = vmatpush1.bf16.msra.mxu0 %v11264
  %16570 = vmatprep.subr.bf16.mxu0 0
  %16571 = vmatpush1.bf16.msra.mxu0 %v11263
  %16572 = vmatprep.subr.bf16.mxu0 0
  %16573 = vmatpush1.bf16.msra.mxu0 %v11262
  %16574 = vmatprep.subr.bf16.mxu0 0
  %16575 = vmatpush2.bf16.msra.mxu0 %v11277
  %16576 = vmatprep.subr.bf16.mxu0 0
  %16577 = vmatpush2.bf16.msra.mxu0 %v11276
  %16578 = vmatprep.subr.bf16.mxu0 0
  %16579 = vmatpush2.bf16.msra.mxu0 %v11275
  %16580 = vmatprep.subr.bf16.mxu0 0
  %16581 = vmatpush2.bf16.msra.mxu0 %v11274
  %16582 = vmatprep.subr.bf16.mxu0 0
  %16583 = vmatpush2.bf16.msra.mxu0 %v11273
  %16584 = vmatprep.subr.bf16.mxu0 0
  %16585 = vmatpush2.bf16.msra.mxu0 %v11272
  %16586 = vmatprep.subr.bf16.mxu0 0
  %16587 = vmatpush2.bf16.msra.mxu0 %v11271
  %16588 = vmatprep.subr.bf16.mxu0 0
  %16589 = vmatpush2.bf16.msra.mxu0 %v11270
  %16590 = vmatprep.mubr.bf16.mxu0 %v392
  %16591 = vmatmul.mubr.bf16.gmra.mxu0 %v391
  %v16592 = vpop.f32.mrf.mxu0
  %v16593 = vadd.f32 %v16553, %v16592
  %v16594 = vpop.f32.mrf.mxu0
  %v16595 = vpop.f32.mrf.mxu0
  %v16596 = vpop.f32.mrf.mxu0
  %16597 = vdwg.mxu0
  %16598 = vmatprep.subr.bf16.mxu0 0
  %16599 = vmatpush1.bf16.msra.mxu0 %v11285
  %16600 = vmatprep.subr.bf16.mxu0 0
  %16601 = vmatpush1.bf16.msra.mxu0 %v11284
  %16602 = vmatprep.subr.bf16.mxu0 0
  %16603 = vmatpush1.bf16.msra.mxu0 %v11283
  %16604 = vmatprep.subr.bf16.mxu0 0
  %16605 = vmatpush1.bf16.msra.mxu0 %v11282
  %16606 = vmatprep.subr.bf16.mxu0 0
  %16607 = vmatpush1.bf16.msra.mxu0 %v11281
  %16608 = vmatprep.subr.bf16.mxu0 0
  %16609 = vmatpush1.bf16.msra.mxu0 %v11280
  %16610 = vmatprep.subr.bf16.mxu0 0
  %16611 = vmatpush1.bf16.msra.mxu0 %v11279
  %16612 = vmatprep.subr.bf16.mxu0 0
  %16613 = vmatpush1.bf16.msra.mxu0 %v11278
  %16614 = vmatprep.subr.bf16.mxu0 0
  %16615 = vmatpush2.bf16.msra.mxu0 %v11293
  %16616 = vmatprep.subr.bf16.mxu0 0
  %16617 = vmatpush2.bf16.msra.mxu0 %v11292
  %16618 = vmatprep.subr.bf16.mxu0 0
  %16619 = vmatpush2.bf16.msra.mxu0 %v11291
  %16620 = vmatprep.subr.bf16.mxu0 0
  %16621 = vmatpush2.bf16.msra.mxu0 %v11290
  %16622 = vmatprep.subr.bf16.mxu0 0
  %16623 = vmatpush2.bf16.msra.mxu0 %v11289
  %16624 = vmatprep.subr.bf16.mxu0 0
  %16625 = vmatpush2.bf16.msra.mxu0 %v11288
  %16626 = vmatprep.subr.bf16.mxu0 0
  %16627 = vmatpush2.bf16.msra.mxu0 %v11287
  %16628 = vmatprep.subr.bf16.mxu0 0
  %16629 = vmatpush2.bf16.msra.mxu0 %v11286
  %16630 = vmatprep.mubr.bf16.mxu0 %v394
  %16631 = vmatmul.mubr.bf16.gmra.mxu0 %v393
  %v16632 = vpop.f32.mrf.mxu0
  %v16633 = vadd.f32 %v16593, %v16632
  %v16634 = vpop.f32.mrf.mxu0
  %v16635 = vpop.f32.mrf.mxu0
  %v16636 = vpop.f32.mrf.mxu0
  %16637 = vdwg.mxu0
  %16638 = vmatprep.subr.bf16.mxu0 0
  %16639 = vmatpush1.bf16.msra.mxu0 %v11301
  %16640 = vmatprep.subr.bf16.mxu0 0
  %16641 = vmatpush1.bf16.msra.mxu0 %v11300
  %16642 = vmatprep.subr.bf16.mxu0 0
  %16643 = vmatpush1.bf16.msra.mxu0 %v11299
  %16644 = vmatprep.subr.bf16.mxu0 0
  %16645 = vmatpush1.bf16.msra.mxu0 %v11298
  %16646 = vmatprep.subr.bf16.mxu0 0
  %16647 = vmatpush1.bf16.msra.mxu0 %v11297
  %16648 = vmatprep.subr.bf16.mxu0 0
  %16649 = vmatpush1.bf16.msra.mxu0 %v11296
  %16650 = vmatprep.subr.bf16.mxu0 0
  %16651 = vmatpush1.bf16.msra.mxu0 %v11295
  %16652 = vmatprep.subr.bf16.mxu0 0
  %16653 = vmatpush1.bf16.msra.mxu0 %v11294
  %16654 = vmatprep.subr.bf16.mxu0 0
  %16655 = vmatpush2.bf16.msra.mxu0 %v11309
  %16656 = vmatprep.subr.bf16.mxu0 0
  %16657 = vmatpush2.bf16.msra.mxu0 %v11308
  %16658 = vmatprep.subr.bf16.mxu0 0
  %16659 = vmatpush2.bf16.msra.mxu0 %v11307
  %16660 = vmatprep.subr.bf16.mxu0 0
  %16661 = vmatpush2.bf16.msra.mxu0 %v11306
  %16662 = vmatprep.subr.bf16.mxu0 0
  %16663 = vmatpush2.bf16.msra.mxu0 %v11305
  %16664 = vmatprep.subr.bf16.mxu0 0
  %16665 = vmatpush2.bf16.msra.mxu0 %v11304
  %16666 = vmatprep.subr.bf16.mxu0 0
  %16667 = vmatpush2.bf16.msra.mxu0 %v11303
  %16668 = vmatprep.subr.bf16.mxu0 0
  %16669 = vmatpush2.bf16.msra.mxu0 %v11302
  %16670 = vmatprep.mubr.bf16.mxu0 %v396
  %16671 = vmatmul.mubr.bf16.gmra.mxu0 %v395
  %v16672 = vpop.f32.mrf.mxu0
  %v16673 = vadd.f32 %v16633, %v16672
  %v16674 = vpop.f32.mrf.mxu0
  %v16675 = vpop.f32.mrf.mxu0
  %v16676 = vpop.f32.mrf.mxu0
  %16677 = vdwg.mxu0
  %16678 = vmatprep.subr.bf16.mxu0 0
  %16679 = vmatpush1.bf16.msra.mxu0 %v11317
  %16680 = vmatprep.subr.bf16.mxu0 0
  %16681 = vmatpush1.bf16.msra.mxu0 %v11316
  %16682 = vmatprep.subr.bf16.mxu0 0
  %16683 = vmatpush1.bf16.msra.mxu0 %v11315
  %16684 = vmatprep.subr.bf16.mxu0 0
  %16685 = vmatpush1.bf16.msra.mxu0 %v11314
  %16686 = vmatprep.subr.bf16.mxu0 0
  %16687 = vmatpush1.bf16.msra.mxu0 %v11313
  %16688 = vmatprep.subr.bf16.mxu0 0
  %16689 = vmatpush1.bf16.msra.mxu0 %v11312
  %16690 = vmatprep.subr.bf16.mxu0 0
  %16691 = vmatpush1.bf16.msra.mxu0 %v11311
  %16692 = vmatprep.subr.bf16.mxu0 0
  %16693 = vmatpush1.bf16.msra.mxu0 %v11310
  %16694 = vmatprep.subr.bf16.mxu0 0
  %16695 = vmatpush2.bf16.msra.mxu0 %v11325
  %16696 = vmatprep.subr.bf16.mxu0 0
  %16697 = vmatpush2.bf16.msra.mxu0 %v11324
  %16698 = vmatprep.subr.bf16.mxu0 0
  %16699 = vmatpush2.bf16.msra.mxu0 %v11323
  %16700 = vmatprep.subr.bf16.mxu0 0
  %16701 = vmatpush2.bf16.msra.mxu0 %v11322
  %16702 = vmatprep.subr.bf16.mxu0 0
  %16703 = vmatpush2.bf16.msra.mxu0 %v11321
  %16704 = vmatprep.subr.bf16.mxu0 0
  %16705 = vmatpush2.bf16.msra.mxu0 %v11320
  %16706 = vmatprep.subr.bf16.mxu0 0
  %16707 = vmatpush2.bf16.msra.mxu0 %v11319
  %16708 = vmatprep.subr.bf16.mxu0 0
  %16709 = vmatpush2.bf16.msra.mxu0 %v11318
  %16710 = vmatprep.mubr.bf16.mxu0 %v398
  %16711 = vmatmul.mubr.bf16.gmra.mxu0 %v397
  %v16712 = vpop.f32.mrf.mxu0
  %v16713 = vadd.f32 %v16673, %v16712
  %v16714 = vpop.f32.mrf.mxu0
  %v16715 = vpop.f32.mrf.mxu0
  %v16716 = vpop.f32.mrf.mxu0
  %16717 = vdwg.mxu0
  %16718 = vmatprep.subr.bf16.mxu0 0
  %16719 = vmatpush1.bf16.msra.mxu0 %v11333
  %16720 = vmatprep.subr.bf16.mxu0 0
  %16721 = vmatpush1.bf16.msra.mxu0 %v11332
  %16722 = vmatprep.subr.bf16.mxu0 0
  %16723 = vmatpush1.bf16.msra.mxu0 %v11331
  %16724 = vmatprep.subr.bf16.mxu0 0
  %16725 = vmatpush1.bf16.msra.mxu0 %v11330
  %16726 = vmatprep.subr.bf16.mxu0 0
  %16727 = vmatpush1.bf16.msra.mxu0 %v11329
  %16728 = vmatprep.subr.bf16.mxu0 0
  %16729 = vmatpush1.bf16.msra.mxu0 %v11328
  %16730 = vmatprep.subr.bf16.mxu0 0
  %16731 = vmatpush1.bf16.msra.mxu0 %v11327
  %16732 = vmatprep.subr.bf16.mxu0 0
  %16733 = vmatpush1.bf16.msra.mxu0 %v11326
  %16734 = vmatprep.subr.bf16.mxu0 0
  %16735 = vmatpush2.bf16.msra.mxu0 %v11341
  %16736 = vmatprep.subr.bf16.mxu0 0
  %16737 = vmatpush2.bf16.msra.mxu0 %v11340
  %16738 = vmatprep.subr.bf16.mxu0 0
  %16739 = vmatpush2.bf16.msra.mxu0 %v11339
  %16740 = vmatprep.subr.bf16.mxu0 0
  %16741 = vmatpush2.bf16.msra.mxu0 %v11338
  %16742 = vmatprep.subr.bf16.mxu0 0
  %16743 = vmatpush2.bf16.msra.mxu0 %v11337
  %16744 = vmatprep.subr.bf16.mxu0 0
  %16745 = vmatpush2.bf16.msra.mxu0 %v11336
  %16746 = vmatprep.subr.bf16.mxu0 0
  %16747 = vmatpush2.bf16.msra.mxu0 %v11335
  %16748 = vmatprep.subr.bf16.mxu0 0
  %16749 = vmatpush2.bf16.msra.mxu0 %v11334
  %16750 = vmatprep.mubr.bf16.mxu0 %v400
  %16751 = vmatmul.mubr.bf16.gmra.mxu0 %v399
  %v16752 = vpop.f32.mrf.mxu0
  %v16753 = vadd.f32 %v16713, %v16752
  %v16754 = vpop.f32.mrf.mxu0
  %v16755 = vpop.f32.mrf.mxu0
  %v16756 = vpop.f32.mrf.mxu0
  %16757 = vdwg.mxu0
  %16758 = vmatprep.subr.bf16.mxu0 0
  %16759 = vmatpush1.bf16.msra.mxu0 %v11349
  %16760 = vmatprep.subr.bf16.mxu0 0
  %16761 = vmatpush1.bf16.msra.mxu0 %v11348
  %16762 = vmatprep.subr.bf16.mxu0 0
  %16763 = vmatpush1.bf16.msra.mxu0 %v11347
  %16764 = vmatprep.subr.bf16.mxu0 0
  %16765 = vmatpush1.bf16.msra.mxu0 %v11346
  %16766 = vmatprep.subr.bf16.mxu0 0
  %16767 = vmatpush1.bf16.msra.mxu0 %v11345
  %16768 = vmatprep.subr.bf16.mxu0 0
  %16769 = vmatpush1.bf16.msra.mxu0 %v11344
  %16770 = vmatprep.subr.bf16.mxu0 0
  %16771 = vmatpush1.bf16.msra.mxu0 %v11343
  %16772 = vmatprep.subr.bf16.mxu0 0
  %16773 = vmatpush1.bf16.msra.mxu0 %v11342
  %16774 = vmatprep.subr.bf16.mxu0 0
  %16775 = vmatpush2.bf16.msra.mxu0 %v11357
  %16776 = vmatprep.subr.bf16.mxu0 0
  %16777 = vmatpush2.bf16.msra.mxu0 %v11356
  %16778 = vmatprep.subr.bf16.mxu0 0
  %16779 = vmatpush2.bf16.msra.mxu0 %v11355
  %16780 = vmatprep.subr.bf16.mxu0 0
  %16781 = vmatpush2.bf16.msra.mxu0 %v11354
  %16782 = vmatprep.subr.bf16.mxu0 0
  %16783 = vmatpush2.bf16.msra.mxu0 %v11353
  %16784 = vmatprep.subr.bf16.mxu0 0
  %16785 = vmatpush2.bf16.msra.mxu0 %v11352
  %16786 = vmatprep.subr.bf16.mxu0 0
  %16787 = vmatpush2.bf16.msra.mxu0 %v11351
  %16788 = vmatprep.subr.bf16.mxu0 0
  %16789 = vmatpush2.bf16.msra.mxu0 %v11350
  %16790 = vmatprep.mubr.bf16.mxu0 %v402
  %16791 = vmatmul.mubr.bf16.gmra.mxu0 %v401
  %v16792 = vpop.f32.mrf.mxu0
  %v16793 = vadd.f32 %v16753, %v16792
  %v16794 = vpop.f32.mrf.mxu0
  %v16795 = vpop.f32.mrf.mxu0
  %v16796 = vpop.f32.mrf.mxu0
  %16797 = vdwg.mxu0
  %16798 = vmatprep.subr.bf16.mxu0 0
  %16799 = vmatpush1.bf16.msra.mxu0 %v11365
  %16800 = vmatprep.subr.bf16.mxu0 0
  %16801 = vmatpush1.bf16.msra.mxu0 %v11364
  %16802 = vmatprep.subr.bf16.mxu0 0
  %16803 = vmatpush1.bf16.msra.mxu0 %v11363
  %16804 = vmatprep.subr.bf16.mxu0 0
  %16805 = vmatpush1.bf16.msra.mxu0 %v11362
  %16806 = vmatprep.subr.bf16.mxu0 0
  %16807 = vmatpush1.bf16.msra.mxu0 %v11361
  %16808 = vmatprep.subr.bf16.mxu0 0
  %16809 = vmatpush1.bf16.msra.mxu0 %v11360
  %16810 = vmatprep.subr.bf16.mxu0 0
  %16811 = vmatpush1.bf16.msra.mxu0 %v11359
  %16812 = vmatprep.subr.bf16.mxu0 0
  %16813 = vmatpush1.bf16.msra.mxu0 %v11358
  %16814 = vmatprep.subr.bf16.mxu0 0
  %16815 = vmatpush2.bf16.msra.mxu0 %v11373
  %16816 = vmatprep.subr.bf16.mxu0 0
  %16817 = vmatpush2.bf16.msra.mxu0 %v11372
  %16818 = vmatprep.subr.bf16.mxu0 0
  %16819 = vmatpush2.bf16.msra.mxu0 %v11371
  %16820 = vmatprep.subr.bf16.mxu0 0
  %16821 = vmatpush2.bf16.msra.mxu0 %v11370
  %16822 = vmatprep.subr.bf16.mxu0 0
  %16823 = vmatpush2.bf16.msra.mxu0 %v11369
  %16824 = vmatprep.subr.bf16.mxu0 0
  %16825 = vmatpush2.bf16.msra.mxu0 %v11368
  %16826 = vmatprep.subr.bf16.mxu0 0
  %16827 = vmatpush2.bf16.msra.mxu0 %v11367
  %16828 = vmatprep.subr.bf16.mxu0 0
  %16829 = vmatpush2.bf16.msra.mxu0 %v11366
  %16830 = vmatprep.mubr.bf16.mxu0 %v404
  %16831 = vmatmul.mubr.bf16.gmra.mxu0 %v403
  %v16832 = vpop.f32.mrf.mxu0
  %v16833 = vadd.f32 %v16793, %v16832
  %v16834 = vpop.f32.mrf.mxu0
  %v16835 = vpop.f32.mrf.mxu0
  %v16836 = vpop.f32.mrf.mxu0
  %16837 = vdwg.mxu0
  %16838 = vmatprep.subr.bf16.mxu0 0
  %16839 = vmatpush1.bf16.msra.mxu0 %v11381
  %16840 = vmatprep.subr.bf16.mxu0 0
  %16841 = vmatpush1.bf16.msra.mxu0 %v11380
  %16842 = vmatprep.subr.bf16.mxu0 0
  %16843 = vmatpush1.bf16.msra.mxu0 %v11379
  %16844 = vmatprep.subr.bf16.mxu0 0
  %16845 = vmatpush1.bf16.msra.mxu0 %v11378
  %16846 = vmatprep.subr.bf16.mxu0 0
  %16847 = vmatpush1.bf16.msra.mxu0 %v11377
  %16848 = vmatprep.subr.bf16.mxu0 0
  %16849 = vmatpush1.bf16.msra.mxu0 %v11376
  %16850 = vmatprep.subr.bf16.mxu0 0
  %16851 = vmatpush1.bf16.msra.mxu0 %v11375
  %16852 = vmatprep.subr.bf16.mxu0 0
  %16853 = vmatpush1.bf16.msra.mxu0 %v11374
  %16854 = vmatprep.subr.bf16.mxu0 0
  %16855 = vmatpush2.bf16.msra.mxu0 %v11389
  %16856 = vmatprep.subr.bf16.mxu0 0
  %16857 = vmatpush2.bf16.msra.mxu0 %v11388
  %16858 = vmatprep.subr.bf16.mxu0 0
  %16859 = vmatpush2.bf16.msra.mxu0 %v11387
  %16860 = vmatprep.subr.bf16.mxu0 0
  %16861 = vmatpush2.bf16.msra.mxu0 %v11386
  %16862 = vmatprep.subr.bf16.mxu0 0
  %16863 = vmatpush2.bf16.msra.mxu0 %v11385
  %16864 = vmatprep.subr.bf16.mxu0 0
  %16865 = vmatpush2.bf16.msra.mxu0 %v11384
  %16866 = vmatprep.subr.bf16.mxu0 0
  %16867 = vmatpush2.bf16.msra.mxu0 %v11383
  %16868 = vmatprep.subr.bf16.mxu0 0
  %16869 = vmatpush2.bf16.msra.mxu0 %v11382
  %16870 = vmatprep.mubr.bf16.mxu0 %v406
  %16871 = vmatmul.mubr.bf16.gmra.mxu0 %v405
  %v16872 = vpop.f32.mrf.mxu0
  %v16873 = vadd.f32 %v16833, %v16872
  %v16874 = vpop.f32.mrf.mxu0
  %v16875 = vpop.f32.mrf.mxu0
  %v16876 = vpop.f32.mrf.mxu0
  %16877 = vdwg.mxu0
  %16878 = vst [vmem:[%s3] sm:$0xff] %v16873
  // Predicated region
  $region14: #{gdc_forward.1} parent=0 // pred_check
    _
  $region15: #{gdc_forward.1} parent=0 // pred_check_branch
    %16880 = sbr.rel (0) target = $region17
  $region16: #{gdc_forward.1} parent=0 // pred_region
    _
  $region17: #{gdc_forward.1} parent=0 // pred_fallthru
    _
  // Predicated region
  $region18: #{gdc_forward.1} parent=0 // pred_check
    _
  $region19: #{gdc_forward.1} parent=0 // pred_check_branch
    %16882 = sbr.rel (0) target = $region21
  $region20: #{gdc_forward.1} parent=0 // pred_region
    _
  $region21: #{gdc_forward.1} parent=0 // pred_fallthru
    _

</llo_original>
